<compile_context>
chip_gen: v5e
topology: v5e:2x2
jax: 0.10.0
libtpu: 0.0.40
codegen_flags: <defaults>
</compile_context>

<pallas_src>
import functools

import jax
import jax.numpy as jnp
from jax.experimental import pallas as pl
from jax.experimental.pallas import tpu as pltpu


# ---------------------------------------------------------------- tile helpers

def _batch_tile(n, max_t=8):
    """Largest divisor of n that is <= max_t (leading block dim of conv grids)."""
    for t in range(min(n, max_t), 0, -1):
        if n % t == 0:
            return t
    return 1


def _row_tile(n, max_t=128):
    """Row tile for the FC head: must equal n or be a multiple of 8 dividing n."""
    if n <= max_t:
        return n
    for t in range(max_t - max_t % 8, 0, -8):
        if n % t == 0:
            return t
    return n


# ---------------------------------------------------------------- conv1 kernel
# Per image: (676, 9) bf16 patches  @  (9, 32) bf16 weights  -> f32, +bias, ReLU.

def _conv1_kernel(p_ref, w_ref, b_ref, o_ref, *, nb):
    for b in range(nb):
        acc = jnp.dot(p_ref[b], w_ref[...], preferred_element_type=jnp.float32)
        o_ref[b] = jnp.maximum(acc + b_ref[...], 0.0)


def conv1_pallas(patches, w1, b1):
    n = patches.shape[0]
    nb = _batch_tile(n, 8)
    return pl.pallas_call(
        functools.partial(_conv1_kernel, nb=nb),
        out_shape=jax.ShapeDtypeStruct((n, 676, 32), jnp.float32),
        grid_spec=pltpu.PrefetchScalarGridSpec(
            num_scalar_prefetch=0,
            grid=(n // nb,),
            in_specs=[
                pl.BlockSpec((nb, 676, 9), lambda i: (i, 0, 0)),
                pl.BlockSpec((9, 32), lambda i: (0, 0)),
                pl.BlockSpec((1, 32), lambda i: (0, 0)),
            ],
            out_specs=pl.BlockSpec((nb, 676, 32), lambda i: (i, 0, 0)),
        ),
        compiler_params=pltpu.CompilerParams(dimension_semantics=("parallel",)),
    )(patches, w1, b1)


# ---------------------------------------------------------------- conv2 kernel
# Per image: act1 (26,26,32) f32 in VMEM; conv = sum over 9 taps of shifted
# (576,32)bf16 @ (32,64)bf16 matmuls into one f32 accumulator (no HBM im2col).

def _conv2_kernel(a_ref, w_ref, b_ref, o_ref, *, nb):
    for b in range(nb):
        acc = jnp.zeros((576, 64), jnp.float32)
        for dw in range(3):
            a_dw = a_ref[b, :, dw:dw + 24, :]            # (26, 24, 32) f32
            flat = a_dw.reshape(26 * 24, 32)             # (624, 32), 24 % 8 == 0
            for dh in range(3):
                lhs = flat[dh * 24:dh * 24 + 576, :].astype(jnp.bfloat16)
                acc = acc + jnp.dot(lhs, w_ref[dh * 3 + dw],
                                    preferred_element_type=jnp.float32)
        # NOTE: reference module applies no ReLU after conv2.
        o_ref[b] = (acc + b_ref[...]).astype(o_ref.dtype)


def conv2_pallas(act1, w2, b2):
    n = act1.shape[0]
    nb = _batch_tile(n, 8)
    return pl.pallas_call(
        functools.partial(_conv2_kernel, nb=nb),
        out_shape=jax.ShapeDtypeStruct((n, 576, 64), jnp.bfloat16),
        grid_spec=pltpu.PrefetchScalarGridSpec(
            num_scalar_prefetch=0,
            grid=(n // nb,),
            in_specs=[
                pl.BlockSpec((nb, 26, 26, 32), lambda i: (i, 0, 0, 0)),
                pl.BlockSpec((9, 32, 64), lambda i: (0, 0, 0)),
                pl.BlockSpec((1, 64), lambda i: (0, 0)),
            ],
            out_specs=pl.BlockSpec((nb, 576, 64), lambda i: (i, 0, 0)),
        ),
        compiler_params=pltpu.CompilerParams(dimension_semantics=("parallel",)),
    )(act1, w2, b2)


# ------------------------------------------------------------- fused FC head
# fc1 (bf16 MXU, f32 acc) + bias + ReLU + fc2 + bias + log_softmax, M-tiled.

def _fc_head_kernel(x_ref, w1_ref, b1_ref, w2_ref, b2_ref, o_ref):
    h = jnp.dot(x_ref[...], w1_ref[...], preferred_element_type=jnp.float32)
    h = jnp.maximum(h + b1_ref[...], 0.0)
    z = jnp.dot(h.astype(jnp.bfloat16), w2_ref[...],
                preferred_element_type=jnp.float32)
    z = z + b2_ref[...]
    m = jnp.max(z, axis=-1, keepdims=True)
    lse = jnp.log(jnp.sum(jnp.exp(z - m), axis=-1, keepdims=True)) + m
    o_ref[...] = z - lse


def fc_head_pallas(xf, w1, b1, w2, b2):
    n = xf.shape[0]
    tm = _row_tile(n, 128)
    return pl.pallas_call(
        _fc_head_kernel,
        out_shape=jax.ShapeDtypeStruct((n, 10), jnp.float32),
        grid_spec=pltpu.PrefetchScalarGridSpec(
            num_scalar_prefetch=0,
            grid=(n // tm,),
            in_specs=[
                pl.BlockSpec((tm, 9216), lambda i: (i, 0)),
                pl.BlockSpec((9216, 128), lambda i: (0, 0)),
                pl.BlockSpec((1, 128), lambda i: (0, 0)),
                pl.BlockSpec((128, 10), lambda i: (0, 0)),
                pl.BlockSpec((1, 10), lambda i: (0, 0)),
            ],
            out_specs=pl.BlockSpec((tm, 10), lambda i: (i, 0)),
        ),
        compiler_params=pltpu.CompilerParams(dimension_semantics=("parallel",)),
    )(xf, w1, b1, w2, b2)


# ---------------------------------------------------------------- forward pass

@jax.jit
def net_forward(params, x):
    n = x.shape[0]
    img = x.reshape(n, 28, 28).astype(jnp.float32)
    # conv1 im2col (tiny: 9x of a 3 KB image) stays as XLA glue; lane dim = 9 taps.
    cols = [img[:, dh:dh + 26, dw:dw + 26] for dh in range(3) for dw in range(3)]
    patches = jnp.stack(cols, axis=-1).reshape(n, 26 * 26, 9).astype(jnp.bfloat16)

    act1 = conv1_pallas(patches, params['conv1_w'], params['conv1_b'])    # (N,676,32) f32
    act1 = act1.reshape(n, 26, 26, 32)                                    # channels-last

    y2 = conv2_pallas(act1, params['conv2_w'], params['conv2_b'])         # (N,576,64) bf16

    # 2x2/2 max pool, channels-last (lane dim = 64).
    # TODO(synk): fuse this pool into the conv2 kernel epilogue.
    pooled = jnp.max(y2.reshape(n, 12, 2, 12, 2, 64), axis=(2, 4))        # (N,12,12,64)

    # TODO(synk): Dropout2d / Dropout are identity (inference semantics).
    xf = pooled.reshape(n, 12 * 12 * 64)                                  # (h, w, c) order

    return fc_head_pallas(xf, params['fc1_w'], params['fc1_b'],
                          params['fc2_w'], params['fc2_b'])               # (N,10) log-probs


# -------------------------------------------------------------- parameter prep

def init_raw_params(key):
    """PyTorch-layout f32 parameters (same init scheme as nn.Conv2d/Linear)."""
    ks = jax.random.split(key, 8)

    def u(k, shape, fan_in):
        bound = 1.0 / jnp.sqrt(float(fan_in))
        return jax.random.uniform(k, shape, jnp.float32, -bound, bound)

    return dict(
        conv1_w=u(ks[0], (32, 1, 3, 3), 9),
        conv1_b=u(ks[1], (32,), 9),
        conv2_w=u(ks[2], (64, 32, 3, 3), 32 * 9),
        conv2_b=u(ks[3], (64,), 32 * 9),
        fc1_w=u(ks[4], (128, 9216), 9216),
        fc1_b=u(ks[5], (128,), 9216),
        fc2_w=u(ks[6], (10, 128), 128),
        fc2_b=u(ks[7], (10,), 128),
    )


def prepare_params(raw):
    """One-time (outside jit) repack: matmul orientation, bf16 cast, and the
    fc1 column permutation from PyTorch's (c,h,w) flatten to our (h,w,c)."""
    w1 = raw['conv1_w'].reshape(32, 9).T.astype(jnp.bfloat16)                  # (9, 32)
    b1 = raw['conv1_b'].reshape(1, 32).astype(jnp.float32)
    w2 = jnp.transpose(raw['conv2_w'], (2, 3, 1, 0)).reshape(9, 32, 64)        # [tap, ci, co]
    w2 = w2.astype(jnp.bfloat16)
    b2 = raw['conv2_b'].reshape(1, 64).astype(jnp.float32)
    fc1 = raw['fc1_w'].reshape(128, 64, 12, 12).transpose(0, 2, 3, 1).reshape(128, 9216)
    fc1_w = fc1.T.astype(jnp.bfloat16)                                         # (9216, 128)
    fc1_b = raw['fc1_b'].reshape(1, 128).astype(jnp.float32)
    fc2_w = raw['fc2_w'].T.astype(jnp.bfloat16)                                # (128, 10)
    fc2_b = raw['fc2_b'].reshape(1, 10).astype(jnp.float32)
    return dict(conv1_w=w1, conv1_b=b1, conv2_w=w2, conv2_b=b2,
                fc1_w=fc1_w, fc1_b=fc1_b, fc2_w=fc2_w, fc2_b=fc2_b)


if __name__ == "__main__":
    key = jax.random.PRNGKey(0)
    pkey, xkey = jax.random.split(key)
    params = prepare_params(init_raw_params(pkey))
    # fc1 expects 9216 = 64*12*12 features -> input must be 1x28x28 (MNIST).
    x = jax.random.normal(xkey, (2, 1, 28, 28), jnp.float32)
    out = net_forward(params, x)
    out = jax.block_until_ready(out)
    assert out.shape == (2, 10)
    # log_softmax rows must logsumexp to ~0
    assert jnp.allclose(jax.scipy.special.logsumexp(out, axis=1), 0.0, atol=1e-4)
    print("KERNEL_OK")
</pallas_src>

<mosaic_0001>
module attributes {stable_mosaic.version = 11 : i64} {
  func.func @_conv1_kernel(%arg0: i32, %arg1: memref<2x676x9xbf16, #tpu.memory_space<vmem>>, %arg2: memref<9x32xbf16, #tpu.memory_space<vmem>>, %arg3: memref<1x32xf32, #tpu.memory_space<vmem>>, %arg4: memref<2x676x32xf32, #tpu.memory_space<vmem>>) attributes {dimension_semantics = [#tpu.dimension_semantics<parallel>], iteration_bounds = array<i64: 1>, scalar_prefetch = 0 : i64, scratch_operands = 0 : i64, tpu.core_type = #tpu.core_type<tc>, window_params = [{transform_indices = @transform_0, window_bounds = array<i64: 2, 676, 9>}, {pipeline_mode = #tpu.pipeline_mode<synchronous>, transform_indices = @transform_1, window_bounds = array<i64: 9, 32>}, {pipeline_mode = #tpu.pipeline_mode<synchronous>, transform_indices = @transform_2, window_bounds = array<i64: 1, 32>}, {transform_indices = @transform_3, window_bounds = array<i64: 2, 676, 32>}]} {
    %c0 = arith.constant 0 : index
    %c0_0 = arith.constant 0 : index
    %c0_1 = arith.constant 0 : index
    %0 = vector.load %arg1[%c0, %c0_0, %c0_1] : memref<2x676x9xbf16, #tpu.memory_space<vmem>>, vector<1x676x9xbf16>
    %1 = vector.shape_cast %0 : vector<1x676x9xbf16> to vector<676x9xbf16>
    %c0_2 = arith.constant 0 : index
    %c0_3 = arith.constant 0 : index
    %2 = vector.load %arg2[%c0_2, %c0_3] : memref<9x32xbf16, #tpu.memory_space<vmem>>, vector<9x32xbf16>
    %cst = arith.constant dense<0.000000e+00> : vector<676x32xf32>
    %3 = tpu.matmul %1, %2, %cst {dimension_numbers = #tpu.dot_dimension_numbers<[1], [0], [0], [1], [0, 0, 1, 1], [], []>} : vector<676x9xbf16>, vector<9x32xbf16>, vector<676x32xf32> -> vector<676x32xf32>
    %c0_4 = arith.constant 0 : index
    %c0_5 = arith.constant 0 : index
    %4 = vector.load %arg3[%c0_4, %c0_5] : memref<1x32xf32, #tpu.memory_space<vmem>>, vector<1x32xf32>
    %5 = vector.broadcast %4 : vector<1x32xf32> to vector<676x32xf32>
    %6 = arith.addf %3, %5 : vector<676x32xf32>
    %cst_6 = arith.constant 0.000000e+00 : f32
    %7 = vector.broadcast %cst_6 : f32 to vector<676x32xf32>
    %8 = arith.maximumf %6, %7 : vector<676x32xf32>
    %c0_7 = arith.constant 0 : index
    %c0_8 = arith.constant 0 : index
    %c0_9 = arith.constant 0 : index
    %9 = vector.load %arg4[%c0_7, %c0_8, %c0_9] : memref<2x676x32xf32, #tpu.memory_space<vmem>>, vector<1x676x32xf32>
    %10 = vector.shape_cast %9 : vector<1x676x32xf32> to vector<676x32xf32>
    %11 = vector.shape_cast %8 : vector<676x32xf32> to vector<1x676x32xf32>
    tpu.vector_store %arg4[%c0_7, %c0_8, %c0_9], %11 {strides = array<i32>} : memref<2x676x32xf32, #tpu.memory_space<vmem>>, vector<1x676x32xf32>,
    %c1 = arith.constant 1 : index
    %c0_10 = arith.constant 0 : index
    %c0_11 = arith.constant 0 : index
    %12 = vector.load %arg1[%c1, %c0_10, %c0_11] : memref<2x676x9xbf16, #tpu.memory_space<vmem>>, vector<1x676x9xbf16>
    %13 = vector.shape_cast %12 : vector<1x676x9xbf16> to vector<676x9xbf16>
    %c0_12 = arith.constant 0 : index
    %c0_13 = arith.constant 0 : index
    %14 = vector.load %arg2[%c0_12, %c0_13] : memref<9x32xbf16, #tpu.memory_space<vmem>>, vector<9x32xbf16>
    %cst_14 = arith.constant dense<0.000000e+00> : vector<676x32xf32>
    %15 = tpu.matmul %13, %14, %cst_14 {dimension_numbers = #tpu.dot_dimension_numbers<[1], [0], [0], [1], [0, 0, 1, 1], [], []>} : vector<676x9xbf16>, vector<9x32xbf16>, vector<676x32xf32> -> vector<676x32xf32>
    %c0_15 = arith.constant 0 : index
    %c0_16 = arith.constant 0 : index
    %16 = vector.load %arg3[%c0_15, %c0_16] : memref<1x32xf32, #tpu.memory_space<vmem>>, vector<1x32xf32>
    %17 = vector.broadcast %16 : vector<1x32xf32> to vector<676x32xf32>
    %18 = arith.addf %15, %17 : vector<676x32xf32>
    %cst_17 = arith.constant 0.000000e+00 : f32
    %19 = vector.broadcast %cst_17 : f32 to vector<676x32xf32>
    %20 = arith.maximumf %18, %19 : vector<676x32xf32>
    %c1_18 = arith.constant 1 : index
    %c0_19 = arith.constant 0 : index
    %c0_20 = arith.constant 0 : index
    %21 = vector.load %arg4[%c1_18, %c0_19, %c0_20] : memref<2x676x32xf32, #tpu.memory_space<vmem>>, vector<1x676x32xf32>
    %22 = vector.shape_cast %21 : vector<1x676x32xf32> to vector<676x32xf32>
    %23 = vector.shape_cast %20 : vector<676x32xf32> to vector<1x676x32xf32>
    tpu.vector_store %arg4[%c1_18, %c0_19, %c0_20], %23 {strides = array<i32>} : memref<2x676x32xf32, #tpu.memory_space<vmem>>, vector<1x676x32xf32>,
    return
  }
  func.func @transform_0(%arg0: i32) -> (i32, i32, i32) {
    %c0_i32 = arith.constant 0 : i32
    %c0_i32_0 = arith.constant 0 : i32
    %c0_i32_1 = arith.constant 0 : i32
    return %arg0, %c0_i32, %c0_i32_0 : i32, i32, i32
  }
  func.func @transform_1(%arg0: i32) -> (i32, i32) {
    %c0_i32 = arith.constant 0 : i32
    %c0_i32_0 = arith.constant 0 : i32
    %c0_i32_1 = arith.constant 0 : i32
    return %c0_i32, %c0_i32_0 : i32, i32
  }
  func.func @transform_2(%arg0: i32) -> (i32, i32) {
    %c0_i32 = arith.constant 0 : i32
    %c0_i32_0 = arith.constant 0 : i32
    %c0_i32_1 = arith.constant 0 : i32
    return %c0_i32, %c0_i32_0 : i32, i32
  }
  func.func @transform_3(%arg0: i32) -> (i32, i32, i32) {
    %c0_i32 = arith.constant 0 : i32
    %c0_i32_0 = arith.constant 0 : i32
    %c0_i32_1 = arith.constant 0 : i32
    return %arg0, %c0_i32, %c0_i32_0 : i32, i32, i32
  }
}

module attributes {stable_mosaic.version = 11 : i64} {
  func.func @_conv2_kernel(%arg0: i32, %arg1: memref<2x26x26x32xf32, #tpu.memory_space<vmem>>, %arg2: memref<9x32x64xbf16, #tpu.memory_space<vmem>>, %arg3: memref<1x64xf32, #tpu.memory_space<vmem>>, %arg4: memref<2x576x64xbf16, #tpu.memory_space<vmem>>) attributes {dimension_semantics = [#tpu.dimension_semantics<parallel>], iteration_bounds = array<i64: 1>, scalar_prefetch = 0 : i64, scratch_operands = 0 : i64, tpu.core_type = #tpu.core_type<tc>, window_params = [{transform_indices = @transform_0, window_bounds = array<i64: 2, 26, 26, 32>}, {pipeline_mode = #tpu.pipeline_mode<synchronous>, transform_indices = @transform_1, window_bounds = array<i64: 9, 32, 64>}, {pipeline_mode = #tpu.pipeline_mode<synchronous>, transform_indices = @transform_2, window_bounds = array<i64: 1, 64>}, {transform_indices = @transform_3, window_bounds = array<i64: 2, 576, 64>}]} {
    %cst = arith.constant 0.000000e+00 : f32
    %0 = vector.broadcast %cst : f32 to vector<576x64xf32>
    %c0 = arith.constant 0 : index
    %c0_0 = arith.constant 0 : index
    %c0_1 = arith.constant 0 : index
    %c0_2 = arith.constant 0 : index
    %1 = vector.load %arg1[%c0, %c0_0, %c0_1, %c0_2] : memref<2x26x26x32xf32, #tpu.memory_space<vmem>>, vector<1x26x24x32xf32>
    %2 = vector.shape_cast %1 : vector<1x26x24x32xf32> to vector<26x24x32xf32>
    %3 = vector.shape_cast %2 : vector<26x24x32xf32> to vector<624x32xf32>
    %4 = vector.extract_strided_slice %3 {offsets = [0, 0], sizes = [576, 32], strides = [1, 1]} : vector<624x32xf32> to vector<576x32xf32>
    %5 = arith.truncf %4 : vector<576x32xf32> to vector<576x32xbf16>
    %c0_3 = arith.constant 0 : index
    %c0_4 = arith.constant 0 : index
    %c0_5 = arith.constant 0 : index
    %6 = vector.load %arg2[%c0_3, %c0_4, %c0_5] : memref<9x32x64xbf16, #tpu.memory_space<vmem>>, vector<1x32x64xbf16>
    %7 = vector.shape_cast %6 : vector<1x32x64xbf16> to vector<32x64xbf16>
    %cst_6 = arith.constant dense<0.000000e+00> : vector<576x64xf32>
    %8 = tpu.matmul %5, %7, %cst_6 {dimension_numbers = #tpu.dot_dimension_numbers<[1], [0], [0], [1], [0, 0, 1, 1], [], []>} : vector<576x32xbf16>, vector<32x64xbf16>, vector<576x64xf32> -> vector<576x64xf32>
    %9 = arith.addf %0, %8 : vector<576x64xf32>
    %10 = vector.extract_strided_slice %3 {offsets = [24, 0], sizes = [576, 32], strides = [1, 1]} : vector<624x32xf32> to vector<576x32xf32>
    %11 = arith.truncf %10 : vector<576x32xf32> to vector<576x32xbf16>
    %c3 = arith.constant 3 : index
    %c0_7 = arith.constant 0 : index
    %c0_8 = arith.constant 0 : index
    %12 = vector.load %arg2[%c3, %c0_7, %c0_8] : memref<9x32x64xbf16, #tpu.memory_space<vmem>>, vector<1x32x64xbf16>
    %13 = vector.shape_cast %12 : vector<1x32x64xbf16> to vector<32x64xbf16>
    %cst_9 = arith.constant dense<0.000000e+00> : vector<576x64xf32>
    %14 = tpu.matmul %11, %13, %cst_9 {dimension_numbers = #tpu.dot_dimension_numbers<[1], [0], [0], [1], [0, 0, 1, 1], [], []>} : vector<576x32xbf16>, vector<32x64xbf16>, vector<576x64xf32> -> vector<576x64xf32>
    %15 = arith.addf %9, %14 : vector<576x64xf32>
    %16 = vector.extract_strided_slice %3 {offsets = [48, 0], sizes = [576, 32], strides = [1, 1]} : vector<624x32xf32> to vector<576x32xf32>
    %17 = arith.truncf %16 : vector<576x32xf32> to vector<576x32xbf16>
    %c6 = arith.constant 6 : index
    %c0_10 = arith.constant 0 : index
    %c0_11 = arith.constant 0 : index
    %18 = vector.load %arg2[%c6, %c0_10, %c0_11] : memref<9x32x64xbf16, #tpu.memory_space<vmem>>, vector<1x32x64xbf16>
    %19 = vector.shape_cast %18 : vector<1x32x64xbf16> to vector<32x64xbf16>
    %cst_12 = arith.constant dense<0.000000e+00> : vector<576x64xf32>
    %20 = tpu.matmul %17, %19, %cst_12 {dimension_numbers = #tpu.dot_dimension_numbers<[1], [0], [0], [1], [0, 0, 1, 1], [], []>} : vector<576x32xbf16>, vector<32x64xbf16>, vector<576x64xf32> -> vector<576x64xf32>
    %21 = arith.addf %15, %20 : vector<576x64xf32>
    %c0_13 = arith.constant 0 : index
    %c0_14 = arith.constant 0 : index
    %c1 = arith.constant 1 : index
    %c0_15 = arith.constant 0 : index
    %22 = vector.load %arg1[%c0_13, %c0_14, %c1, %c0_15] : memref<2x26x26x32xf32, #tpu.memory_space<vmem>>, vector<1x26x24x32xf32>
    %23 = vector.shape_cast %22 : vector<1x26x24x32xf32> to vector<26x24x32xf32>
    %24 = vector.shape_cast %23 : vector<26x24x32xf32> to vector<624x32xf32>
    %25 = vector.extract_strided_slice %24 {offsets = [0, 0], sizes = [576, 32], strides = [1, 1]} : vector<624x32xf32> to vector<576x32xf32>
    %26 = arith.truncf %25 : vector<576x32xf32> to vector<576x32xbf16>
    %c1_16 = arith.constant 1 : index
    %c0_17 = arith.constant 0 : index
    %c0_18 = arith.constant 0 : index
    %27 = vector.load %arg2[%c1_16, %c0_17, %c0_18] : memref<9x32x64xbf16, #tpu.memory_space<vmem>>, vector<1x32x64xbf16>
    %28 = vector.shape_cast %27 : vector<1x32x64xbf16> to vector<32x64xbf16>
    %cst_19 = arith.constant dense<0.000000e+00> : vector<576x64xf32>
    %29 = tpu.matmul %26, %28, %cst_19 {dimension_numbers = #tpu.dot_dimension_numbers<[1], [0], [0], [1], [0, 0, 1, 1], [], []>} : vector<576x32xbf16>, vector<32x64xbf16>, vector<576x64xf32> -> vector<576x64xf32>
    %30 = arith.addf %21, %29 : vector<576x64xf32>
    %31 = vector.extract_strided_slice %24 {offsets = [24, 0], sizes = [576, 32], strides = [1, 1]} : vector<624x32xf32> to vector<576x32xf32>
    %32 = arith.truncf %31 : vector<576x32xf32> to vector<576x32xbf16>
    %c4 = arith.constant 4 : index
    %c0_20 = arith.constant 0 : index
    %c0_21 = arith.constant 0 : index
    %33 = vector.load %arg2[%c4, %c0_20, %c0_21] : memref<9x32x64xbf16, #tpu.memory_space<vmem>>, vector<1x32x64xbf16>
    %34 = vector.shape_cast %33 : vector<1x32x64xbf16> to vector<32x64xbf16>
    %cst_22 = arith.constant dense<0.000000e+00> : vector<576x64xf32>
    %35 = tpu.matmul %32, %34, %cst_22 {dimension_numbers = #tpu.dot_dimension_numbers<[1], [0], [0], [1], [0, 0, 1, 1], [], []>} : vector<576x32xbf16>, vector<32x64xbf16>, vector<576x64xf32> -> vector<576x64xf32>
    %36 = arith.addf %30, %35 : vector<576x64xf32>
    %37 = vector.extract_strided_slice %24 {offsets = [48, 0], sizes = [576, 32], strides = [1, 1]} : vector<624x32xf32> to vector<576x32xf32>
    %38 = arith.truncf %37 : vector<576x32xf32> to vector<576x32xbf16>
    %c7 = arith.constant 7 : index
    %c0_23 = arith.constant 0 : index
    %c0_24 = arith.constant 0 : index
    %39 = vector.load %arg2[%c7, %c0_23, %c0_24] : memref<9x32x64xbf16, #tpu.memory_space<vmem>>, vector<1x32x64xbf16>
    %40 = vector.shape_cast %39 : vector<1x32x64xbf16> to vector<32x64xbf16>
    %cst_25 = arith.constant dense<0.000000e+00> : vector<576x64xf32>
    %41 = tpu.matmul %38, %40, %cst_25 {dimension_numbers = #tpu.dot_dimension_numbers<[1], [0], [0], [1], [0, 0, 1, 1], [], []>} : vector<576x32xbf16>, vector<32x64xbf16>, vector<576x64xf32> -> vector<576x64xf32>
    %42 = arith.addf %36, %41 : vector<576x64xf32>
    %c0_26 = arith.constant 0 : index
    %c0_27 = arith.constant 0 : index
    %c2 = arith.constant 2 : index
    %c0_28 = arith.constant 0 : index
    %43 = vector.load %arg1[%c0_26, %c0_27, %c2, %c0_28] : memref<2x26x26x32xf32, #tpu.memory_space<vmem>>, vector<1x26x24x32xf32>
    %44 = vector.shape_cast %43 : vector<1x26x24x32xf32> to vector<26x24x32xf32>
    %45 = vector.shape_cast %44 : vector<26x24x32xf32> to vector<624x32xf32>
    %46 = vector.extract_strided_slice %45 {offsets = [0, 0], sizes = [576, 32], strides = [1, 1]} : vector<624x32xf32> to vector<576x32xf32>
    %47 = arith.truncf %46 : vector<576x32xf32> to vector<576x32xbf16>
    %c2_29 = arith.constant 2 : index
    %c0_30 = arith.constant 0 : index
    %c0_31 = arith.constant 0 : index
    %48 = vector.load %arg2[%c2_29, %c0_30, %c0_31] : memref<9x32x64xbf16, #tpu.memory_space<vmem>>, vector<1x32x64xbf16>
    %49 = vector.shape_cast %48 : vector<1x32x64xbf16> to vector<32x64xbf16>
    %cst_32 = arith.constant dense<0.000000e+00> : vector<576x64xf32>
    %50 = tpu.matmul %47, %49, %cst_32 {dimension_numbers = #tpu.dot_dimension_numbers<[1], [0], [0], [1], [0, 0, 1, 1], [], []>} : vector<576x32xbf16>, vector<32x64xbf16>, vector<576x64xf32> -> vector<576x64xf32>
    %51 = arith.addf %42, %50 : vector<576x64xf32>
    %52 = vector.extract_strided_slice %45 {offsets = [24, 0], sizes = [576, 32], strides = [1, 1]} : vector<624x32xf32> to vector<576x32xf32>
    %53 = arith.truncf %52 : vector<576x32xf32> to vector<576x32xbf16>
    %c5 = arith.constant 5 : index
    %c0_33 = arith.constant 0 : index
    %c0_34 = arith.constant 0 : index
    %54 = vector.load %arg2[%c5, %c0_33, %c0_34] : memref<9x32x64xbf16, #tpu.memory_space<vmem>>, vector<1x32x64xbf16>
    %55 = vector.shape_cast %54 : vector<1x32x64xbf16> to vector<32x64xbf16>
    %cst_35 = arith.constant dense<0.000000e+00> : vector<576x64xf32>
    %56 = tpu.matmul %53, %55, %cst_35 {dimension_numbers = #tpu.dot_dimension_numbers<[1], [0], [0], [1], [0, 0, 1, 1], [], []>} : vector<576x32xbf16>, vector<32x64xbf16>, vector<576x64xf32> -> vector<576x64xf32>
    %57 = arith.addf %51, %56 : vector<576x64xf32>
    %58 = vector.extract_strided_slice %45 {offsets = [48, 0], sizes = [576, 32], strides = [1, 1]} : vector<624x32xf32> to vector<576x32xf32>
    %59 = arith.truncf %58 : vector<576x32xf32> to vector<576x32xbf16>
    %c8 = arith.constant 8 : index
    %c0_36 = arith.constant 0 : index
    %c0_37 = arith.constant 0 : index
    %60 = vector.load %arg2[%c8, %c0_36, %c0_37] : memref<9x32x64xbf16, #tpu.memory_space<vmem>>, vector<1x32x64xbf16>
    %61 = vector.shape_cast %60 : vector<1x32x64xbf16> to vector<32x64xbf16>
    %cst_38 = arith.constant dense<0.000000e+00> : vector<576x64xf32>
    %62 = tpu.matmul %59, %61, %cst_38 {dimension_numbers = #tpu.dot_dimension_numbers<[1], [0], [0], [1], [0, 0, 1, 1], [], []>} : vector<576x32xbf16>, vector<32x64xbf16>, vector<576x64xf32> -> vector<576x64xf32>
    %63 = arith.addf %57, %62 : vector<576x64xf32>
    %c0_39 = arith.constant 0 : index
    %c0_40 = arith.constant 0 : index
    %64 = vector.load %arg3[%c0_39, %c0_40] : memref<1x64xf32, #tpu.memory_space<vmem>>, vector<1x64xf32>
    %65 = vector.broadcast %64 : vector<1x64xf32> to vector<576x64xf32>
    %66 = arith.addf %63, %65 : vector<576x64xf32>
    %67 = arith.truncf %66 : vector<576x64xf32> to vector<576x64xbf16>
    %c0_41 = arith.constant 0 : index
    %c0_42 = arith.constant 0 : index
    %c0_43 = arith.constant 0 : index
    %68 = vector.load %arg4[%c0_41, %c0_42, %c0_43] : memref<2x576x64xbf16, #tpu.memory_space<vmem>>, vector<1x576x64xbf16>
    %69 = vector.shape_cast %68 : vector<1x576x64xbf16> to vector<576x64xbf16>
    %70 = vector.shape_cast %67 : vector<576x64xbf16> to vector<1x576x64xbf16>
    tpu.vector_store %arg4[%c0_41, %c0_42, %c0_43], %70 {strides = array<i32>} : memref<2x576x64xbf16, #tpu.memory_space<vmem>>, vector<1x576x64xbf16>,
    %cst_44 = arith.constant 0.000000e+00 : f32
    %71 = vector.broadcast %cst_44 : f32 to vector<576x64xf32>
    %c1_45 = arith.constant 1 : index
    %c0_46 = arith.constant 0 : index
    %c0_47 = arith.constant 0 : index
    %c0_48 = arith.constant 0 : index
    %72 = vector.load %arg1[%c1_45, %c0_46, %c0_47, %c0_48] : memref<2x26x26x32xf32, #tpu.memory_space<vmem>>, vector<1x26x24x32xf32>
    %73 = vector.shape_cast %72 : vector<1x26x24x32xf32> to vector<26x24x32xf32>
    %74 = vector.shape_cast %73 : vector<26x24x32xf32> to vector<624x32xf32>
    %75 = vector.extract_strided_slice %74 {offsets = [0, 0], sizes = [576, 32], strides = [1, 1]} : vector<624x32xf32> to vector<576x32xf32>
    %76 = arith.truncf %75 : vector<576x32xf32> to vector<576x32xbf16>
    %c0_49 = arith.constant 0 : index
    %c0_50 = arith.constant 0 : index
    %c0_51 = arith.constant 0 : index
    %77 = vector.load %arg2[%c0_49, %c0_50, %c0_51] : memref<9x32x64xbf16, #tpu.memory_space<vmem>>, vector<1x32x64xbf16>
    %78 = vector.shape_cast %77 : vector<1x32x64xbf16> to vector<32x64xbf16>
    %cst_52 = arith.constant dense<0.000000e+00> : vector<576x64xf32>
    %79 = tpu.matmul %76, %78, %cst_52 {dimension_numbers = #tpu.dot_dimension_numbers<[1], [0], [0], [1], [0, 0, 1, 1], [], []>} : vector<576x32xbf16>, vector<32x64xbf16>, vector<576x64xf32> -> vector<576x64xf32>
    %80 = arith.addf %71, %79 : vector<576x64xf32>
    %81 = vector.extract_strided_slice %74 {offsets = [24, 0], sizes = [576, 32], strides = [1, 1]} : vector<624x32xf32> to vector<576x32xf32>
    %82 = arith.truncf %81 : vector<576x32xf32> to vector<576x32xbf16>
    %c3_53 = arith.constant 3 : index
    %c0_54 = arith.constant 0 : index
    %c0_55 = arith.constant 0 : index
    %83 = vector.load %arg2[%c3_53, %c0_54, %c0_55] : memref<9x32x64xbf16, #tpu.memory_space<vmem>>, vector<1x32x64xbf16>
    %84 = vector.shape_cast %83 : vector<1x32x64xbf16> to vector<32x64xbf16>
    %cst_56 = arith.constant dense<0.000000e+00> : vector<576x64xf32>
    %85 = tpu.matmul %82, %84, %cst_56 {dimension_numbers = #tpu.dot_dimension_numbers<[1], [0], [0], [1], [0, 0, 1, 1], [], []>} : vector<576x32xbf16>, vector<32x64xbf16>, vector<576x64xf32> -> vector<576x64xf32>
    %86 = arith.addf %80, %85 : vector<576x64xf32>
    %87 = vector.extract_strided_slice %74 {offsets = [48, 0], sizes = [576, 32], strides = [1, 1]} : vector<624x32xf32> to vector<576x32xf32>
    %88 = arith.truncf %87 : vector<576x32xf32> to vector<576x32xbf16>
    %c6_57 = arith.constant 6 : index
    %c0_58 = arith.constant 0 : index
    %c0_59 = arith.constant 0 : index
    %89 = vector.load %arg2[%c6_57, %c0_58, %c0_59] : memref<9x32x64xbf16, #tpu.memory_space<vmem>>, vector<1x32x64xbf16>
    %90 = vector.shape_cast %89 : vector<1x32x64xbf16> to vector<32x64xbf16>
    %cst_60 = arith.constant dense<0.000000e+00> : vector<576x64xf32>
    %91 = tpu.matmul %88, %90, %cst_60 {dimension_numbers = #tpu.dot_dimension_numbers<[1], [0], [0], [1], [0, 0, 1, 1], [], []>} : vector<576x32xbf16>, vector<32x64xbf16>, vector<576x64xf32> -> vector<576x64xf32>
    %92 = arith.addf %86, %91 : vector<576x64xf32>
    %c1_61 = arith.constant 1 : index
    %c0_62 = arith.constant 0 : index
    %c1_63 = arith.constant 1 : index
    %c0_64 = arith.constant 0 : index
    %93 = vector.load %arg1[%c1_61, %c0_62, %c1_63, %c0_64] : memref<2x26x26x32xf32, #tpu.memory_space<vmem>>, vector<1x26x24x32xf32>
    %94 = vector.shape_cast %93 : vector<1x26x24x32xf32> to vector<26x24x32xf32>
    %95 = vector.shape_cast %94 : vector<26x24x32xf32> to vector<624x32xf32>
    %96 = vector.extract_strided_slice %95 {offsets = [0, 0], sizes = [576, 32], strides = [1, 1]} : vector<624x32xf32> to vector<576x32xf32>
    %97 = arith.truncf %96 : vector<576x32xf32> to vector<576x32xbf16>
    %c1_65 = arith.constant 1 : index
    %c0_66 = arith.constant 0 : index
    %c0_67 = arith.constant 0 : index
    %98 = vector.load %arg2[%c1_65, %c0_66, %c0_67] : memref<9x32x64xbf16, #tpu.memory_space<vmem>>, vector<1x32x64xbf16>
    %99 = vector.shape_cast %98 : vector<1x32x64xbf16> to vector<32x64xbf16>
    %cst_68 = arith.constant dense<0.000000e+00> : vector<576x64xf32>
    %100 = tpu.matmul %97, %99, %cst_68 {dimension_numbers = #tpu.dot_dimension_numbers<[1], [0], [0], [1], [0, 0, 1, 1], [], []>} : vector<576x32xbf16>, vector<32x64xbf16>, vector<576x64xf32> -> vector<576x64xf32>
    %101 = arith.addf %92, %100 : vector<576x64xf32>
    %102 = vector.extract_strided_slice %95 {offsets = [24, 0], sizes = [576, 32], strides = [1, 1]} : vector<624x32xf32> to vector<576x32xf32>
    %103 = arith.truncf %102 : vector<576x32xf32> to vector<576x32xbf16>
    %c4_69 = arith.constant 4 : index
    %c0_70 = arith.constant 0 : index
    %c0_71 = arith.constant 0 : index
    %104 = vector.load %arg2[%c4_69, %c0_70, %c0_71] : memref<9x32x64xbf16, #tpu.memory_space<vmem>>, vector<1x32x64xbf16>
    %105 = vector.shape_cast %104 : vector<1x32x64xbf16> to vector<32x64xbf16>
    %cst_72 = arith.constant dense<0.000000e+00> : vector<576x64xf32>
    %106 = tpu.matmul %103, %105, %cst_72 {dimension_numbers = #tpu.dot_dimension_numbers<[1], [0], [0], [1], [0, 0, 1, 1], [], []>} : vector<576x32xbf16>, vector<32x64xbf16>, vector<576x64xf32> -> vector<576x64xf32>
    %107 = arith.addf %101, %106 : vector<576x64xf32>
    %108 = vector.extract_strided_slice %95 {offsets = [48, 0], sizes = [576, 32], strides = [1, 1]} : vector<624x32xf32> to vector<576x32xf32>
    %109 = arith.truncf %108 : vector<576x32xf32> to vector<576x32xbf16>
    %c7_73 = arith.constant 7 : index
    %c0_74 = arith.constant 0 : index
    %c0_75 = arith.constant 0 : index
    %110 = vector.load %arg2[%c7_73, %c0_74, %c0_75] : memref<9x32x64xbf16, #tpu.memory_space<vmem>>, vector<1x32x64xbf16>
    %111 = vector.shape_cast %110 : vector<1x32x64xbf16> to vector<32x64xbf16>
    %cst_76 = arith.constant dense<0.000000e+00> : vector<576x64xf32>
    %112 = tpu.matmul %109, %111, %cst_76 {dimension_numbers = #tpu.dot_dimension_numbers<[1], [0], [0], [1], [0, 0, 1, 1], [], []>} : vector<576x32xbf16>, vector<32x64xbf16>, vector<576x64xf32> -> vector<576x64xf32>
    %113 = arith.addf %107, %112 : vector<576x64xf32>
    %c1_77 = arith.constant 1 : index
    %c0_78 = arith.constant 0 : index
    %c2_79 = arith.constant 2 : index
    %c0_80 = arith.constant 0 : index
    %114 = vector.load %arg1[%c1_77, %c0_78, %c2_79, %c0_80] : memref<2x26x26x32xf32, #tpu.memory_space<vmem>>, vector<1x26x24x32xf32>
    %115 = vector.shape_cast %114 : vector<1x26x24x32xf32> to vector<26x24x32xf32>
    %116 = vector.shape_cast %115 : vector<26x24x32xf32> to vector<624x32xf32>
    %117 = vector.extract_strided_slice %116 {offsets = [0, 0], sizes = [576, 32], strides = [1, 1]} : vector<624x32xf32> to vector<576x32xf32>
    %118 = arith.truncf %117 : vector<576x32xf32> to vector<576x32xbf16>
    %c2_81 = arith.constant 2 : index
    %c0_82 = arith.constant 0 : index
    %c0_83 = arith.constant 0 : index
    %119 = vector.load %arg2[%c2_81, %c0_82, %c0_83] : memref<9x32x64xbf16, #tpu.memory_space<vmem>>, vector<1x32x64xbf16>
    %120 = vector.shape_cast %119 : vector<1x32x64xbf16> to vector<32x64xbf16>
    %cst_84 = arith.constant dense<0.000000e+00> : vector<576x64xf32>
    %121 = tpu.matmul %118, %120, %cst_84 {dimension_numbers = #tpu.dot_dimension_numbers<[1], [0], [0], [1], [0, 0, 1, 1], [], []>} : vector<576x32xbf16>, vector<32x64xbf16>, vector<576x64xf32> -> vector<576x64xf32>
    %122 = arith.addf %113, %121 : vector<576x64xf32>
    %123 = vector.extract_strided_slice %116 {offsets = [24, 0], sizes = [576, 32], strides = [1, 1]} : vector<624x32xf32> to vector<576x32xf32>
    %124 = arith.truncf %123 : vector<576x32xf32> to vector<576x32xbf16>
    %c5_85 = arith.constant 5 : index
    %c0_86 = arith.constant 0 : index
    %c0_87 = arith.constant 0 : index
    %125 = vector.load %arg2[%c5_85, %c0_86, %c0_87] : memref<9x32x64xbf16, #tpu.memory_space<vmem>>, vector<1x32x64xbf16>
    %126 = vector.shape_cast %125 : vector<1x32x64xbf16> to vector<32x64xbf16>
    %cst_88 = arith.constant dense<0.000000e+00> : vector<576x64xf32>
    %127 = tpu.matmul %124, %126, %cst_88 {dimension_numbers = #tpu.dot_dimension_numbers<[1], [0], [0], [1], [0, 0, 1, 1], [], []>} : vector<576x32xbf16>, vector<32x64xbf16>, vector<576x64xf32> -> vector<576x64xf32>
    %128 = arith.addf %122, %127 : vector<576x64xf32>
    %129 = vector.extract_strided_slice %116 {offsets = [48, 0], sizes = [576, 32], strides = [1, 1]} : vector<624x32xf32> to vector<576x32xf32>
    %130 = arith.truncf %129 : vector<576x32xf32> to vector<576x32xbf16>
    %c8_89 = arith.constant 8 : index
    %c0_90 = arith.constant 0 : index
    %c0_91 = arith.constant 0 : index
    %131 = vector.load %arg2[%c8_89, %c0_90, %c0_91] : memref<9x32x64xbf16, #tpu.memory_space<vmem>>, vector<1x32x64xbf16>
    %132 = vector.shape_cast %131 : vector<1x32x64xbf16> to vector<32x64xbf16>
    %cst_92 = arith.constant dense<0.000000e+00> : vector<576x64xf32>
    %133 = tpu.matmul %130, %132, %cst_92 {dimension_numbers = #tpu.dot_dimension_numbers<[1], [0], [0], [1], [0, 0, 1, 1], [], []>} : vector<576x32xbf16>, vector<32x64xbf16>, vector<576x64xf32> -> vector<576x64xf32>
    %134 = arith.addf %128, %133 : vector<576x64xf32>
    %c0_93 = arith.constant 0 : index
    %c0_94 = arith.constant 0 : index
    %135 = vector.load %arg3[%c0_93, %c0_94] : memref<1x64xf32, #tpu.memory_space<vmem>>, vector<1x64xf32>
    %136 = vector.broadcast %135 : vector<1x64xf32> to vector<576x64xf32>
    %137 = arith.addf %134, %136 : vector<576x64xf32>
    %138 = arith.truncf %137 : vector<576x64xf32> to vector<576x64xbf16>
    %c1_95 = arith.constant 1 : index
    %c0_96 = arith.constant 0 : index
    %c0_97 = arith.constant 0 : index
    %139 = vector.load %arg4[%c1_95, %c0_96, %c0_97] : memref<2x576x64xbf16, #tpu.memory_space<vmem>>, vector<1x576x64xbf16>
    %140 = vector.shape_cast %139 : vector<1x576x64xbf16> to vector<576x64xbf16>
    %141 = vector.shape_cast %138 : vector<576x64xbf16> to vector<1x576x64xbf16>
    tpu.vector_store %arg4[%c1_95, %c0_96, %c0_97], %141 {strides = array<i32>} : memref<2x576x64xbf16, #tpu.memory_space<vmem>>, vector<1x576x64xbf16>,
    return
  }
  func.func @transform_0(%arg0: i32) -> (i32, i32, i32, i32) {
    %c0_i32 = arith.constant 0 : i32
    %c0_i32_0 = arith.constant 0 : i32
    %c0_i32_1 = arith.constant 0 : i32
    %c0_i32_2 = arith.constant 0 : i32
    return %arg0, %c0_i32, %c0_i32_0, %c0_i32_1 : i32, i32, i32, i32
  }
  func.func @transform_1(%arg0: i32) -> (i32, i32, i32) {
    %c0_i32 = arith.constant 0 : i32
    %c0_i32_0 = arith.constant 0 : i32
    %c0_i32_1 = arith.constant 0 : i32
    %c0_i32_2 = arith.constant 0 : i32
    return %c0_i32, %c0_i32_0, %c0_i32_1 : i32, i32, i32
  }
  func.func @transform_2(%arg0: i32) -> (i32, i32) {
    %c0_i32 = arith.constant 0 : i32
    %c0_i32_0 = arith.constant 0 : i32
    %c0_i32_1 = arith.constant 0 : i32
    return %c0_i32, %c0_i32_0 : i32, i32
  }
  func.func @transform_3(%arg0: i32) -> (i32, i32, i32) {
    %c0_i32 = arith.constant 0 : i32
    %c0_i32_0 = arith.constant 0 : i32
    %c0_i32_1 = arith.constant 0 : i32
    return %arg0, %c0_i32, %c0_i32_0 : i32, i32, i32
  }
}

module attributes {stable_mosaic.version = 11 : i64} {
  func.func @_fc_head_kernel(%arg0: i32, %arg1: memref<2x9216xbf16, #tpu.memory_space<vmem>>, %arg2: memref<9216x128xbf16, #tpu.memory_space<vmem>>, %arg3: memref<1x128xf32, #tpu.memory_space<vmem>>, %arg4: memref<128x10xbf16, #tpu.memory_space<vmem>>, %arg5: memref<1x10xf32, #tpu.memory_space<vmem>>, %arg6: memref<2x10xf32, #tpu.memory_space<vmem>>) attributes {dimension_semantics = [#tpu.dimension_semantics<parallel>], iteration_bounds = array<i64: 1>, scalar_prefetch = 0 : i64, scratch_operands = 0 : i64, tpu.core_type = #tpu.core_type<tc>, window_params = [{transform_indices = @transform_0, window_bounds = array<i64: 2, 9216>}, {pipeline_mode = #tpu.pipeline_mode<synchronous>, transform_indices = @transform_1, window_bounds = array<i64: 9216, 128>}, {pipeline_mode = #tpu.pipeline_mode<synchronous>, transform_indices = @transform_2, window_bounds = array<i64: 1, 128>}, {pipeline_mode = #tpu.pipeline_mode<synchronous>, transform_indices = @transform_3, window_bounds = array<i64: 128, 10>}, {pipeline_mode = #tpu.pipeline_mode<synchronous>, transform_indices = @transform_4, window_bounds = array<i64: 1, 10>}, {transform_indices = @transform_5, window_bounds = array<i64: 2, 10>}]} {
    %c0 = arith.constant 0 : index
    %c0_0 = arith.constant 0 : index
    %0 = vector.load %arg1[%c0, %c0_0] : memref<2x9216xbf16, #tpu.memory_space<vmem>>, vector<2x9216xbf16>
    %c0_1 = arith.constant 0 : index
    %c0_2 = arith.constant 0 : index
    %1 = vector.load %arg2[%c0_1, %c0_2] : memref<9216x128xbf16, #tpu.memory_space<vmem>>, vector<9216x128xbf16>
    %cst = arith.constant dense<0.000000e+00> : vector<2x128xf32>
    %2 = tpu.matmul %0, %1, %cst {dimension_numbers = #tpu.dot_dimension_numbers<[1], [0], [0], [1], [0, 0, 1, 1], [], []>} : vector<2x9216xbf16>, vector<9216x128xbf16>, vector<2x128xf32> -> vector<2x128xf32>
    %c0_3 = arith.constant 0 : index
    %c0_4 = arith.constant 0 : index
    %3 = vector.load %arg3[%c0_3, %c0_4] : memref<1x128xf32, #tpu.memory_space<vmem>>, vector<1x128xf32>
    %4 = vector.broadcast %3 : vector<1x128xf32> to vector<2x128xf32>
    %5 = arith.addf %2, %4 : vector<2x128xf32>
    %cst_5 = arith.constant 0.000000e+00 : f32
    %6 = vector.broadcast %cst_5 : f32 to vector<2x128xf32>
    %7 = arith.maximumf %5, %6 : vector<2x128xf32>
    %8 = arith.truncf %7 : vector<2x128xf32> to vector<2x128xbf16>
    %c0_6 = arith.constant 0 : index
    %c0_7 = arith.constant 0 : index
    %9 = vector.load %arg4[%c0_6, %c0_7] : memref<128x10xbf16, #tpu.memory_space<vmem>>, vector<128x10xbf16>
    %cst_8 = arith.constant dense<0.000000e+00> : vector<2x10xf32>
    %10 = tpu.matmul %8, %9, %cst_8 {dimension_numbers = #tpu.dot_dimension_numbers<[1], [0], [0], [1], [0, 0, 1, 1], [], []>} : vector<2x128xbf16>, vector<128x10xbf16>, vector<2x10xf32> -> vector<2x10xf32>
    %c0_9 = arith.constant 0 : index
    %c0_10 = arith.constant 0 : index
    %11 = vector.load %arg5[%c0_9, %c0_10] : memref<1x10xf32, #tpu.memory_space<vmem>>, vector<1x10xf32>
    %12 = vector.broadcast %11 : vector<1x10xf32> to vector<2x10xf32>
    %13 = arith.addf %10, %12 : vector<2x10xf32>
    %cst_11 = arith.constant dense<0xFF800000> : vector<2xf32>
    %14 = vector.multi_reduction <maximumf>, %13, %cst_11 [1] : vector<2x10xf32> to vector<2xf32>
    %15 = vector.shape_cast %14 : vector<2xf32> to vector<2x1xf32>
    %16 = vector.broadcast %15 : vector<2x1xf32> to vector<2x10xf32>
    %17 = arith.subf %13, %16 : vector<2x10xf32>
    %18 = math.exp %17 : vector<2x10xf32>
    %cst_12 = arith.constant dense<0.000000e+00> : vector<2xf32>
    %19 = vector.multi_reduction <add>, %18, %cst_12 [1] : vector<2x10xf32> to vector<2xf32>
    %20 = vector.shape_cast %19 : vector<2xf32> to vector<2x1xf32>
    %21 = math.log %20 : vector<2x1xf32>
    %22 = arith.addf %21, %15 : vector<2x1xf32>
    %23 = vector.broadcast %22 : vector<2x1xf32> to vector<2x10xf32>
    %24 = arith.subf %13, %23 : vector<2x10xf32>
    %c0_13 = arith.constant 0 : index
    %c0_14 = arith.constant 0 : index
    %25 = vector.load %arg6[%c0_13, %c0_14] : memref<2x10xf32, #tpu.memory_space<vmem>>, vector<2x10xf32>
    tpu.vector_store %arg6[%c0_13, %c0_14], %24 {strides = array<i32>} : memref<2x10xf32, #tpu.memory_space<vmem>>, vector<2x10xf32>,
    return
  }
  func.func @transform_0(%arg0: i32) -> (i32, i32) {
    %c0_i32 = arith.constant 0 : i32
    %c0_i32_0 = arith.constant 0 : i32
    return %arg0, %c0_i32 : i32, i32
  }
  func.func @transform_1(%arg0: i32) -> (i32, i32) {
    %c0_i32 = arith.constant 0 : i32
    %c0_i32_0 = arith.constant 0 : i32
    %c0_i32_1 = arith.constant 0 : i32
    return %c0_i32, %c0_i32_0 : i32, i32
  }
  func.func @transform_2(%arg0: i32) -> (i32, i32) {
    %c0_i32 = arith.constant 0 : i32
    %c0_i32_0 = arith.constant 0 : i32
    %c0_i32_1 = arith.constant 0 : i32
    return %c0_i32, %c0_i32_0 : i32, i32
  }
  func.func @transform_3(%arg0: i32) -> (i32, i32) {
    %c0_i32 = arith.constant 0 : i32
    %c0_i32_0 = arith.constant 0 : i32
    %c0_i32_1 = arith.constant 0 : i32
    return %c0_i32, %c0_i32_0 : i32, i32
  }
  func.func @transform_4(%arg0: i32) -> (i32, i32) {
    %c0_i32 = arith.constant 0 : i32
    %c0_i32_0 = arith.constant 0 : i32
    %c0_i32_1 = arith.constant 0 : i32
    return %c0_i32, %c0_i32_0 : i32, i32
  }
  func.func @transform_5(%arg0: i32) -> (i32, i32) {
    %c0_i32 = arith.constant 0 : i32
    %c0_i32_0 = arith.constant 0 : i32
    return %arg0, %c0_i32 : i32, i32
  }
}

</mosaic_0001>

<llo_original>
// kernel: net_forward.3
$region0: #{net_forward.3}
  #allocation0 [shape = 'u32[]', space=smem, size = 0x4, offset = 0x4, fixed_abs, tag = 'smem constant byte address 0x4 - core index']
  #allocation1 [shape = 'u32[72,128]{1,0:T(1,128)}', space=vmem, size = 0x9000, scoped, tag = 'internal scratch']
  %s0 = inlined_call_operand.vmem [shape: bf16[2,676,9], index: 0, kind: input, shape index: {}]
  %s1 = inlined_call_operand.hbm [shape: bf16[9,32], index: 1, kind: input, shape index: {}]
  %s2 = inlined_call_operand.hbm [shape: f32[1,32], index: 2, kind: input, shape index: {}]
  %s3 = inlined_call_operand.vmem [shape: f32[2,676,32], index: 3, kind: output, shape index: {}]
  %s4 = sld [smem:[#allocation0]]
  $region30: #{net_forward.3} parent=0
    _
  %s6 = ssub.s32 1, %s4
  %s7 = scalar_select 0, %s6, %s4
  $region1: #{net_forward.3} parent=0
    #allocation2 [shape = 'u8[4096]{0}', space=vmem, size = 0x1000, scoped, tag = 'input window, operand 1, single buffered']
    #allocation3 [shape = 's32[1]{0}', space=sflag, size = 0x4, scoped, tag = 'scoped memory for net_forward.3']
    #allocation4 [shape = 'u8[512]{0}', space=vmem, size = 0x400, scoped, tag = 'input window, operand 2, single buffered']
    #allocation5 [shape = 's32[1]{0}', space=sflag, size = 0x4, scoped, tag = 'scoped memory for net_forward.3']
    %8 = vsyncpa [#allocation3], 0
    %9 = vsyncpa [#allocation5], 0
    // Predicated region
    $region2: #{net_forward.3} parent=1 // pred_check
      _
    $region3: #{net_forward.3} parent=1 // pred_check_branch
      %11 = sbr.rel (0) target = $region5
    $region4: #{net_forward.3} parent=1 // pred_region
      _
    $region5: #{net_forward.3} parent=1 // pred_fallthru
      _
    // Predicated region
    $region6: #{net_forward.3} parent=1 // pred_check
      _
    $region7: #{net_forward.3} parent=1 // pred_check_branch
      %13 = sbr.rel (0) target = $region9
    $region8: #{net_forward.3} parent=1 // pred_region
      %15 = vsyncadd [#allocation3], 0
      %s16 = sshll.u32 %s1, 4
      %s17 = int_to_ptr.hbm [resolvable:$true] %s16
      %s18 = sshll.u32 [#allocation2], 4
      %s19 = int_to_ptr.vmem [resolvable:$true] %s18
      %24 = dma.hbm_to_vmem [thread:$0]  %s17, 128, %s19, [#allocation3], 64, 64, 4
    $region9: #{net_forward.3} parent=1 // pred_fallthru
      _
    // Predicated region
    $region10: #{net_forward.3} parent=1 // pred_check
      _
    $region11: #{net_forward.3} parent=1 // pred_check_branch
      %26 = sbr.rel (0) target = $region13
    $region12: #{net_forward.3} parent=1 // pred_region
      %28 = vsyncadd [#allocation5], 0
      %s30 = sshll.u32 %s2, 4
      %s31 = int_to_ptr.hbm [resolvable:$true] %s30
      %s32 = sshll.u32 [#allocation4], 4
      %s33 = int_to_ptr.vmem [resolvable:$true] %s32
      %35 = dma.hbm_to_vmem [thread:$0]  %s31, 16, %s33, [#allocation5]
    $region13: #{net_forward.3} parent=1 // pred_fallthru
      _
    // Predicated region
    $region14: #{net_forward.3} parent=1 // pred_check
      _
    $region15: #{net_forward.3} parent=1 // pred_check_branch
      %37 = sbr.rel (0) target = $region17
    $region16: #{net_forward.3} parent=1 // pred_region
      %39 = dma.done [#allocation3], 128
    $region17: #{net_forward.3} parent=1 // pred_fallthru
      _
    // Predicated region
    $region18: #{net_forward.3} parent=1 // pred_check
      _
    $region19: #{net_forward.3} parent=1 // pred_check_branch
      %41 = sbr.rel (0) target = $region21
    $region20: #{net_forward.3} parent=1 // pred_region
      %43 = dma.done [#allocation5], 16
    $region21: #{net_forward.3} parent=1 // pred_fallthru
      _
    %v45 = vld [vmem:[%s0] sm:$0xf]
    %v46 = vld [vmem:[%s0 + $0x4] sm:$0xf]
    %v47 = vld [vmem:[%s0 + $0x8] sm:$0xf]
    %v48 = vld [vmem:[%s0 + $0xc] sm:$0xf]
    %v49 = vld [vmem:[%s0 + $0x10] sm:$0xf]
    %v50 = vld [vmem:[%s0 + $0x14] sm:$0xf]
    %v51 = vld [vmem:[%s0 + $0x18] sm:$0xf]
    %v52 = vld [vmem:[%s0 + $0x1c] sm:$0xf]
    %v53 = vld [vmem:[%s0 + $0x20] sm:$0xf]
    %v54 = vld [vmem:[%s0 + $0x24] sm:$0xf]
    %v55 = vld [vmem:[%s0 + $0x28] sm:$0xf]
    %v56 = vld [vmem:[%s0 + $0x2c] sm:$0xf]
    %v57 = vld [vmem:[%s0 + $0x30] sm:$0xf]
    %v58 = vld [vmem:[%s0 + $0x34] sm:$0xf]
    %v59 = vld [vmem:[%s0 + $0x38] sm:$0xf]
    %v60 = vld [vmem:[%s0 + $0x3c] sm:$0xf]
    %v61 = vld [vmem:[%s0 + $0x40] sm:$0xf]
    %v62 = vld [vmem:[%s0 + $0x44] sm:$0xf]
    %v63 = vld [vmem:[%s0 + $0x48] sm:$0xf]
    %v64 = vld [vmem:[%s0 + $0x4c] sm:$0xf]
    %v65 = vld [vmem:[%s0 + $0x50] sm:$0xf]
    %v66 = vld [vmem:[%s0 + $0x54] sm:$0xf]
    %v67 = vld [vmem:[%s0 + $0x58] sm:$0xf]
    %v68 = vld [vmem:[%s0 + $0x5c] sm:$0xf]
    %v69 = vld [vmem:[%s0 + $0x60] sm:$0xf]
    %v70 = vld [vmem:[%s0 + $0x64] sm:$0xf]
    %v71 = vld [vmem:[%s0 + $0x68] sm:$0xf]
    %v72 = vld [vmem:[%s0 + $0x6c] sm:$0xf]
    %v73 = vld [vmem:[%s0 + $0x70] sm:$0xf]
    %v74 = vld [vmem:[%s0 + $0x74] sm:$0xf]
    %v75 = vld [vmem:[%s0 + $0x78] sm:$0xf]
    %v76 = vld [vmem:[%s0 + $0x7c] sm:$0xf]
    %v77 = vld [vmem:[%s0 + $0x80] sm:$0xf]
    %v78 = vld [vmem:[%s0 + $0x84] sm:$0xf]
    %v79 = vld [vmem:[%s0 + $0x88] sm:$0xf]
    %v80 = vld [vmem:[%s0 + $0x8c] sm:$0xf]
    %v81 = vld [vmem:[%s0 + $0x90] sm:$0xf]
    %v82 = vld [vmem:[%s0 + $0x94] sm:$0xf]
    %v83 = vld [vmem:[%s0 + $0x98] sm:$0xf]
    %v84 = vld [vmem:[%s0 + $0x9c] sm:$0xf]
    %v85 = vld [vmem:[%s0 + $0xa0] sm:$0xf]
    %v86 = vld [vmem:[%s0 + $0xa4] sm:$0xf]
    %v87 = vld [vmem:[%s0 + $0xa8] sm:$0xf]
    %v88 = vld [vmem:[%s0 + $0xac] sm:$0xf]
    %v89 = vld [vmem:[%s0 + $0xb0] sm:$0xf]
    %v90 = vld [vmem:[%s0 + $0xb4] sm:$0xf]
    %v91 = vld [vmem:[%s0 + $0xb8] sm:$0xf]
    %v92 = vld [vmem:[%s0 + $0xbc] sm:$0xf]
    %v93 = vld [vmem:[%s0 + $0xc0] sm:$0xf]
    %v94 = vld [vmem:[%s0 + $0xc4] sm:$0xf]
    %v95 = vld [vmem:[%s0 + $0xc8] sm:$0xf]
    %v96 = vld [vmem:[%s0 + $0xcc] sm:$0xf]
    %v97 = vld [vmem:[%s0 + $0xd0] sm:$0xf]
    %v98 = vld [vmem:[%s0 + $0xd4] sm:$0xf]
    %v99 = vld [vmem:[%s0 + $0xd8] sm:$0xf]
    %v100 = vld [vmem:[%s0 + $0xdc] sm:$0xf]
    %v101 = vld [vmem:[%s0 + $0xe0] sm:$0xf]
    %v102 = vld [vmem:[%s0 + $0xe4] sm:$0xf]
    %v103 = vld [vmem:[%s0 + $0xe8] sm:$0xf]
    %v104 = vld [vmem:[%s0 + $0xec] sm:$0xf]
    %v105 = vld [vmem:[%s0 + $0xf0] sm:$0xf]
    %v106 = vld [vmem:[%s0 + $0xf4] sm:$0xf]
    %v107 = vld [vmem:[%s0 + $0xf8] sm:$0xf]
    %v108 = vld [vmem:[%s0 + $0xfc] sm:$0xf]
    %v109 = vld [vmem:[%s0 + $0x100] sm:$0xf]
    %v110 = vld [vmem:[%s0 + $0x104] sm:$0xf]
    %v111 = vld [vmem:[%s0 + $0x108] sm:$0xf]
    %v112 = vld [vmem:[%s0 + $0x10c] sm:$0xf]
    %v113 = vld [vmem:[%s0 + $0x110] sm:$0xf]
    %v114 = vld [vmem:[%s0 + $0x114] sm:$0xf]
    %v115 = vld [vmem:[%s0 + $0x118] sm:$0xf]
    %v116 = vld [vmem:[%s0 + $0x11c] sm:$0xf]
    %v117 = vld [vmem:[%s0 + $0x120] sm:$0xf]
    %v118 = vld [vmem:[%s0 + $0x124] sm:$0xf]
    %v119 = vld [vmem:[%s0 + $0x128] sm:$0xf]
    %v120 = vld [vmem:[%s0 + $0x12c] sm:$0xf]
    %v121 = vld [vmem:[%s0 + $0x130] sm:$0xf]
    %v122 = vld [vmem:[%s0 + $0x134] sm:$0xf]
    %v123 = vld [vmem:[%s0 + $0x138] sm:$0xf]
    %v124 = vld [vmem:[%s0 + $0x13c] sm:$0xf]
    %v125 = vld [vmem:[%s0 + $0x140] sm:$0xf]
    %v126 = vld [vmem:[%s0 + $0x144] sm:$0xf]
    %v127 = vld [vmem:[%s0 + $0x148] sm:$0xf]
    %v128 = vld [vmem:[%s0 + $0x14c] sm:$0xf]
    %v129 = vld [vmem:[%s0 + $0x150] sm:$0x3]
    %v130 = vld [vmem:[#allocation2] sm:$0xf]
    %v131 = vld [vmem:[#allocation2 + $0x4] sm:$0x1]
    %v132 = vld [vmem:[#allocation4] sm:$0x1]
    %v134 = vperm.slane %v132, 0
    %v221 = vunpack.c.l.b16 %v45
    %v222 = vunpack.c.l.b16 %v46
    %v223 = vunpack.c.l.b16 %v47
    %v224 = vunpack.c.l.b16 %v48
    %v225 = vunpack.c.l.b16 %v49
    %v226 = vunpack.c.l.b16 %v50
    %v227 = vunpack.c.l.b16 %v51
    %v228 = vunpack.c.l.b16 %v52
    %v229 = vunpack.c.l.b16 %v53
    %v230 = vunpack.c.l.b16 %v54
    %v231 = vunpack.c.l.b16 %v55
    %v232 = vunpack.c.l.b16 %v56
    %v233 = vunpack.c.l.b16 %v57
    %v234 = vunpack.c.l.b16 %v58
    %v235 = vunpack.c.l.b16 %v59
    %v236 = vunpack.c.l.b16 %v60
    %v237 = vunpack.c.l.b16 %v61
    %v238 = vunpack.c.l.b16 %v62
    %v239 = vunpack.c.l.b16 %v63
    %v240 = vunpack.c.l.b16 %v64
    %v241 = vunpack.c.l.b16 %v65
    %v242 = vunpack.c.l.b16 %v66
    %v243 = vunpack.c.l.b16 %v67
    %v244 = vunpack.c.l.b16 %v68
    %v245 = vunpack.c.l.b16 %v69
    %v246 = vunpack.c.l.b16 %v70
    %v247 = vunpack.c.l.b16 %v71
    %v248 = vunpack.c.l.b16 %v72
    %v249 = vunpack.c.l.b16 %v73
    %v250 = vunpack.c.l.b16 %v74
    %v251 = vunpack.c.l.b16 %v75
    %v252 = vunpack.c.l.b16 %v76
    %v253 = vunpack.c.l.b16 %v77
    %v254 = vunpack.c.l.b16 %v78
    %v255 = vunpack.c.l.b16 %v79
    %v256 = vunpack.c.l.b16 %v80
    %v257 = vunpack.c.l.b16 %v81
    %v258 = vunpack.c.l.b16 %v82
    %v259 = vunpack.c.l.b16 %v83
    %v260 = vunpack.c.l.b16 %v84
    %v261 = vunpack.c.l.b16 %v85
    %v262 = vunpack.c.l.b16 %v86
    %v263 = vunpack.c.l.b16 %v87
    %v264 = vunpack.c.l.b16 %v88
    %v265 = vunpack.c.l.b16 %v89
    %v266 = vunpack.c.l.b16 %v90
    %v267 = vunpack.c.l.b16 %v91
    %v268 = vunpack.c.l.b16 %v92
    %v269 = vunpack.c.l.b16 %v93
    %v270 = vunpack.c.l.b16 %v94
    %v271 = vunpack.c.l.b16 %v95
    %v272 = vunpack.c.l.b16 %v96
    %v273 = vunpack.c.l.b16 %v97
    %v274 = vunpack.c.l.b16 %v98
    %v275 = vunpack.c.l.b16 %v99
    %v276 = vunpack.c.l.b16 %v100
    %v277 = vunpack.c.l.b16 %v101
    %v278 = vunpack.c.l.b16 %v102
    %v279 = vunpack.c.l.b16 %v103
    %v280 = vunpack.c.l.b16 %v104
    %v281 = vunpack.c.l.b16 %v105
    %v282 = vunpack.c.l.b16 %v106
    %v283 = vunpack.c.l.b16 %v107
    %v284 = vunpack.c.l.b16 %v108
    %v285 = vunpack.c.l.b16 %v109
    %v286 = vunpack.c.l.b16 %v110
    %v287 = vunpack.c.l.b16 %v111
    %v288 = vunpack.c.l.b16 %v112
    %v289 = vunpack.c.l.b16 %v113
    %v290 = vunpack.c.l.b16 %v114
    %v291 = vunpack.c.l.b16 %v115
    %v292 = vunpack.c.l.b16 %v116
    %v293 = vunpack.c.l.b16 %v117
    %v294 = vunpack.c.l.b16 %v118
    %v295 = vunpack.c.l.b16 %v119
    %v296 = vunpack.c.l.b16 %v120
    %v297 = vunpack.c.l.b16 %v121
    %v298 = vunpack.c.l.b16 %v122
    %v299 = vunpack.c.l.b16 %v123
    %v300 = vunpack.c.l.b16 %v124
    %v301 = vunpack.c.l.b16 %v125
    %v302 = vunpack.c.l.b16 %v126
    %v303 = vunpack.c.l.b16 %v127
    %v304 = vunpack.c.l.b16 %v128
    %v305 = vunpack.c.l.b16 %v129
    %v306 = vpack.c.b16 %v222, %v221
    %v307 = vpack.c.b16 %v224, %v223
    %v308 = vpack.c.b16 %v226, %v225
    %v309 = vpack.c.b16 %v228, %v227
    %v310 = vpack.c.b16 %v230, %v229
    %v311 = vpack.c.b16 %v232, %v231
    %v312 = vpack.c.b16 %v234, %v233
    %v313 = vpack.c.b16 %v236, %v235
    %v314 = vpack.c.b16 %v238, %v237
    %v315 = vpack.c.b16 %v240, %v239
    %v316 = vpack.c.b16 %v242, %v241
    %v317 = vpack.c.b16 %v244, %v243
    %v318 = vpack.c.b16 %v246, %v245
    %v319 = vpack.c.b16 %v248, %v247
    %v320 = vpack.c.b16 %v250, %v249
    %v321 = vpack.c.b16 %v252, %v251
    %v322 = vpack.c.b16 %v254, %v253
    %v323 = vpack.c.b16 %v256, %v255
    %v324 = vpack.c.b16 %v258, %v257
    %v325 = vpack.c.b16 %v260, %v259
    %v326 = vpack.c.b16 %v262, %v261
    %v327 = vpack.c.b16 %v264, %v263
    %v328 = vpack.c.b16 %v266, %v265
    %v329 = vpack.c.b16 %v268, %v267
    %v330 = vpack.c.b16 %v270, %v269
    %v331 = vpack.c.b16 %v272, %v271
    %v332 = vpack.c.b16 %v274, %v273
    %v333 = vpack.c.b16 %v276, %v275
    %v334 = vpack.c.b16 %v278, %v277
    %v335 = vpack.c.b16 %v280, %v279
    %v336 = vpack.c.b16 %v282, %v281
    %v337 = vpack.c.b16 %v284, %v283
    %v338 = vpack.c.b16 %v286, %v285
    %v339 = vpack.c.b16 %v288, %v287
    %v340 = vpack.c.b16 %v290, %v289
    %v341 = vpack.c.b16 %v292, %v291
    %v342 = vpack.c.b16 %v294, %v293
    %v343 = vpack.c.b16 %v296, %v295
    %v344 = vpack.c.b16 %v298, %v297
    %v345 = vpack.c.b16 %v300, %v299
    %v346 = vpack.c.b16 %v302, %v301
    %v347 = vpack.c.b16 %v304, %v303
    %v348 = vpack.c.b16 %v305, %v305
    %v351 = vunpack.c.l.b16 %v130
    %v352 = vunpack.c.l.b16 %v131
    %v353 = vpack.c.b16 %v352, %v351
    %vm354 = vcmask 72704
    %v356 = vsel %vm354, %v306, 0
    %v359 = vsel %vm354, %v307, 0
    %v362 = vsel %vm354, %v308, 0
    %v365 = vsel %vm354, %v309, 0
    %v368 = vsel %vm354, %v310, 0
    %v371 = vsel %vm354, %v311, 0
    %v374 = vsel %vm354, %v312, 0
    %v377 = vsel %vm354, %v313, 0
    %v380 = vsel %vm354, %v314, 0
    %v383 = vsel %vm354, %v315, 0
    %v386 = vsel %vm354, %v316, 0
    %v389 = vsel %vm354, %v317, 0
    %v392 = vsel %vm354, %v318, 0
    %v395 = vsel %vm354, %v319, 0
    %v398 = vsel %vm354, %v320, 0
    %v401 = vsel %vm354, %v321, 0
    %v404 = vsel %vm354, %v322, 0
    %v407 = vsel %vm354, %v323, 0
    %v410 = vsel %vm354, %v324, 0
    %v413 = vsel %vm354, %v325, 0
    %v416 = vsel %vm354, %v326, 0
    %v419 = vsel %vm354, %v327, 0
    %v422 = vsel %vm354, %v328, 0
    %v425 = vsel %vm354, %v329, 0
    %v428 = vsel %vm354, %v330, 0
    %v431 = vsel %vm354, %v331, 0
    %v434 = vsel %vm354, %v332, 0
    %v437 = vsel %vm354, %v333, 0
    %v440 = vsel %vm354, %v334, 0
    %v443 = vsel %vm354, %v335, 0
    %v446 = vsel %vm354, %v336, 0
    %v449 = vsel %vm354, %v337, 0
    %v452 = vsel %vm354, %v338, 0
    %v455 = vsel %vm354, %v339, 0
    %v458 = vsel %vm354, %v340, 0
    %v461 = vsel %vm354, %v341, 0
    %v464 = vsel %vm354, %v342, 0
    %v467 = vsel %vm354, %v343, 0
    %v470 = vsel %vm354, %v344, 0
    %v473 = vsel %vm354, %v345, 0
    %v476 = vsel %vm354, %v346, 0
    %v479 = vsel %vm354, %v347, 0
    %v482 = vsel %vm354, %v348, 0
    %vm484 = vcmask 1043456
    %vm485 = vcmask 1044480
    %v486 = vsel %vm484, 4294967295, 65535
    %v487 = vsel %vm485, %v486, 0
    %v489 = vand.u32 %v353, %v487
    %491 = vmatpush.bf16.msra.mxu0 0
    %492 = vmatpush.bf16.msra.mxu0 0
    %493 = vmatpush.bf16.msra.mxu0 0
    %494 = vmatpush.bf16.msra.mxu0 0
    %495 = vmatpush.bf16.msra.mxu0 0
    %496 = vmatpush.bf16.msra.mxu0 0
    %497 = vmatpush.bf16.msra.mxu0 0
    %498 = vmatpush.bf16.msra.mxu0 %v489
    %499 = vmatmul.bf16.gmra.mxu0 %v356
    %v500 = vpop.f32.mrf.mxu0
    %v501 = vadd.f32 %v134, %v500
    %v502 = vpop.f32.mrf.mxu0
    %v503 = vadd.f32 %v134, %v502
    %504 = vmatmul.bf16.gmra.mxu0 %v359
    %v505 = vpop.f32.mrf.mxu0
    %v506 = vadd.f32 %v134, %v505
    %v507 = vpop.f32.mrf.mxu0
    %v508 = vadd.f32 %v134, %v507
    %509 = vmatmul.bf16.gmra.mxu0 %v362
    %v510 = vpop.f32.mrf.mxu0
    %v511 = vadd.f32 %v134, %v510
    %v512 = vpop.f32.mrf.mxu0
    %v513 = vadd.f32 %v134, %v512
    %514 = vmatmul.bf16.gmra.mxu0 %v365
    %v515 = vpop.f32.mrf.mxu0
    %v516 = vadd.f32 %v134, %v515
    %v517 = vpop.f32.mrf.mxu0
    %v518 = vadd.f32 %v134, %v517
    %519 = vmatmul.bf16.gmra.mxu0 %v368
    %v520 = vpop.f32.mrf.mxu0
    %v521 = vadd.f32 %v134, %v520
    %v522 = vpop.f32.mrf.mxu0
    %v523 = vadd.f32 %v134, %v522
    %524 = vmatmul.bf16.gmra.mxu0 %v371
    %v525 = vpop.f32.mrf.mxu0
    %v526 = vadd.f32 %v134, %v525
    %v527 = vpop.f32.mrf.mxu0
    %v528 = vadd.f32 %v134, %v527
    %529 = vmatmul.bf16.gmra.mxu0 %v374
    %v530 = vpop.f32.mrf.mxu0
    %v531 = vadd.f32 %v134, %v530
    %v532 = vpop.f32.mrf.mxu0
    %v533 = vadd.f32 %v134, %v532
    %534 = vmatmul.bf16.gmra.mxu0 %v377
    %v535 = vpop.f32.mrf.mxu0
    %v536 = vadd.f32 %v134, %v535
    %v537 = vpop.f32.mrf.mxu0
    %v538 = vadd.f32 %v134, %v537
    %539 = vmatmul.bf16.gmra.mxu0 %v380
    %v540 = vpop.f32.mrf.mxu0
    %v541 = vadd.f32 %v134, %v540
    %v542 = vpop.f32.mrf.mxu0
    %v543 = vadd.f32 %v134, %v542
    %544 = vmatmul.bf16.gmra.mxu0 %v383
    %v545 = vpop.f32.mrf.mxu0
    %v546 = vadd.f32 %v134, %v545
    %v547 = vpop.f32.mrf.mxu0
    %v548 = vadd.f32 %v134, %v547
    %549 = vmatmul.bf16.gmra.mxu0 %v386
    %v550 = vpop.f32.mrf.mxu0
    %v551 = vadd.f32 %v134, %v550
    %v552 = vpop.f32.mrf.mxu0
    %v553 = vadd.f32 %v134, %v552
    %554 = vmatmul.bf16.gmra.mxu0 %v389
    %v555 = vpop.f32.mrf.mxu0
    %v556 = vadd.f32 %v134, %v555
    %v557 = vpop.f32.mrf.mxu0
    %v558 = vadd.f32 %v134, %v557
    %559 = vmatmul.bf16.gmra.mxu0 %v392
    %v560 = vpop.f32.mrf.mxu0
    %v561 = vadd.f32 %v134, %v560
    %v562 = vpop.f32.mrf.mxu0
    %v563 = vadd.f32 %v134, %v562
    %564 = vmatmul.bf16.gmra.mxu0 %v395
    %v565 = vpop.f32.mrf.mxu0
    %v566 = vadd.f32 %v134, %v565
    %v567 = vpop.f32.mrf.mxu0
    %v568 = vadd.f32 %v134, %v567
    %569 = vmatmul.bf16.gmra.mxu0 %v398
    %v570 = vpop.f32.mrf.mxu0
    %v571 = vadd.f32 %v134, %v570
    %v572 = vpop.f32.mrf.mxu0
    %v573 = vadd.f32 %v134, %v572
    %574 = vmatmul.bf16.gmra.mxu0 %v401
    %v575 = vpop.f32.mrf.mxu0
    %v576 = vadd.f32 %v134, %v575
    %v577 = vpop.f32.mrf.mxu0
    %v578 = vadd.f32 %v134, %v577
    %579 = vmatmul.bf16.gmra.mxu0 %v404
    %v580 = vpop.f32.mrf.mxu0
    %v581 = vadd.f32 %v134, %v580
    %v582 = vpop.f32.mrf.mxu0
    %v583 = vadd.f32 %v134, %v582
    %584 = vmatmul.bf16.gmra.mxu0 %v407
    %v585 = vpop.f32.mrf.mxu0
    %v586 = vadd.f32 %v134, %v585
    %v587 = vpop.f32.mrf.mxu0
    %v588 = vadd.f32 %v134, %v587
    %589 = vmatmul.bf16.gmra.mxu0 %v410
    %v590 = vpop.f32.mrf.mxu0
    %v591 = vadd.f32 %v134, %v590
    %v592 = vpop.f32.mrf.mxu0
    %v593 = vadd.f32 %v134, %v592
    %594 = vmatmul.bf16.gmra.mxu0 %v413
    %v595 = vpop.f32.mrf.mxu0
    %v596 = vadd.f32 %v134, %v595
    %v597 = vpop.f32.mrf.mxu0
    %v598 = vadd.f32 %v134, %v597
    %599 = vmatmul.bf16.gmra.mxu0 %v416
    %v600 = vpop.f32.mrf.mxu0
    %v601 = vadd.f32 %v134, %v600
    %v602 = vpop.f32.mrf.mxu0
    %v603 = vadd.f32 %v134, %v602
    %604 = vmatmul.bf16.gmra.mxu0 %v419
    %v605 = vpop.f32.mrf.mxu0
    %v606 = vadd.f32 %v134, %v605
    %v607 = vpop.f32.mrf.mxu0
    %v608 = vadd.f32 %v134, %v607
    %609 = vmatmul.bf16.gmra.mxu0 %v422
    %v610 = vpop.f32.mrf.mxu0
    %v611 = vadd.f32 %v134, %v610
    %v612 = vpop.f32.mrf.mxu0
    %v613 = vadd.f32 %v134, %v612
    %614 = vmatmul.bf16.gmra.mxu0 %v425
    %v615 = vpop.f32.mrf.mxu0
    %v616 = vadd.f32 %v134, %v615
    %v617 = vpop.f32.mrf.mxu0
    %v618 = vadd.f32 %v134, %v617
    %619 = vmatmul.bf16.gmra.mxu0 %v428
    %v620 = vpop.f32.mrf.mxu0
    %v621 = vadd.f32 %v134, %v620
    %v622 = vpop.f32.mrf.mxu0
    %v623 = vadd.f32 %v134, %v622
    %624 = vmatmul.bf16.gmra.mxu0 %v431
    %v625 = vpop.f32.mrf.mxu0
    %v626 = vadd.f32 %v134, %v625
    %v627 = vpop.f32.mrf.mxu0
    %v628 = vadd.f32 %v134, %v627
    %629 = vmatmul.bf16.gmra.mxu0 %v434
    %v630 = vpop.f32.mrf.mxu0
    %v631 = vadd.f32 %v134, %v630
    %v632 = vpop.f32.mrf.mxu0
    %v633 = vadd.f32 %v134, %v632
    %634 = vmatmul.bf16.gmra.mxu0 %v437
    %v635 = vpop.f32.mrf.mxu0
    %v636 = vadd.f32 %v134, %v635
    %v637 = vpop.f32.mrf.mxu0
    %v638 = vadd.f32 %v134, %v637
    %639 = vmatmul.bf16.gmra.mxu0 %v440
    %v640 = vpop.f32.mrf.mxu0
    %v641 = vadd.f32 %v134, %v640
    %v642 = vpop.f32.mrf.mxu0
    %v643 = vadd.f32 %v134, %v642
    %644 = vmatmul.bf16.gmra.mxu0 %v443
    %v645 = vpop.f32.mrf.mxu0
    %v646 = vadd.f32 %v134, %v645
    %v647 = vpop.f32.mrf.mxu0
    %v648 = vadd.f32 %v134, %v647
    %649 = vmatmul.bf16.gmra.mxu0 %v446
    %v650 = vpop.f32.mrf.mxu0
    %v651 = vadd.f32 %v134, %v650
    %v652 = vpop.f32.mrf.mxu0
    %v653 = vadd.f32 %v134, %v652
    %654 = vmatmul.bf16.gmra.mxu0 %v449
    %v655 = vpop.f32.mrf.mxu0
    %v656 = vadd.f32 %v134, %v655
    %v657 = vpop.f32.mrf.mxu0
    %v658 = vadd.f32 %v134, %v657
    %659 = vmatmul.bf16.gmra.mxu0 %v452
    %v660 = vpop.f32.mrf.mxu0
    %v661 = vadd.f32 %v134, %v660
    %v662 = vpop.f32.mrf.mxu0
    %v663 = vadd.f32 %v134, %v662
    %664 = vmatmul.bf16.gmra.mxu0 %v455
    %v665 = vpop.f32.mrf.mxu0
    %v666 = vadd.f32 %v134, %v665
    %v667 = vpop.f32.mrf.mxu0
    %v668 = vadd.f32 %v134, %v667
    %669 = vmatmul.bf16.gmra.mxu0 %v458
    %v670 = vpop.f32.mrf.mxu0
    %v671 = vadd.f32 %v134, %v670
    %v672 = vpop.f32.mrf.mxu0
    %v673 = vadd.f32 %v134, %v672
    %674 = vmatmul.bf16.gmra.mxu0 %v461
    %v675 = vpop.f32.mrf.mxu0
    %v676 = vadd.f32 %v134, %v675
    %v677 = vpop.f32.mrf.mxu0
    %v678 = vadd.f32 %v134, %v677
    %679 = vmatmul.bf16.gmra.mxu0 %v464
    %v680 = vpop.f32.mrf.mxu0
    %v681 = vadd.f32 %v134, %v680
    %v682 = vpop.f32.mrf.mxu0
    %v683 = vadd.f32 %v134, %v682
    %684 = vmatmul.bf16.gmra.mxu0 %v467
    %v685 = vpop.f32.mrf.mxu0
    %v686 = vadd.f32 %v134, %v685
    %v687 = vpop.f32.mrf.mxu0
    %v688 = vadd.f32 %v134, %v687
    %689 = vmatmul.bf16.gmra.mxu0 %v470
    %v690 = vpop.f32.mrf.mxu0
    %v691 = vadd.f32 %v134, %v690
    %v692 = vpop.f32.mrf.mxu0
    %v693 = vadd.f32 %v134, %v692
    %694 = vmatmul.bf16.gmra.mxu0 %v473
    %v695 = vpop.f32.mrf.mxu0
    %v696 = vadd.f32 %v134, %v695
    %v697 = vpop.f32.mrf.mxu0
    %v698 = vadd.f32 %v134, %v697
    %699 = vmatmul.bf16.gmra.mxu0 %v476
    %v700 = vpop.f32.mrf.mxu0
    %v701 = vadd.f32 %v134, %v700
    %v702 = vpop.f32.mrf.mxu0
    %v703 = vadd.f32 %v134, %v702
    %704 = vmatmul.bf16.gmra.mxu0 %v479
    %v705 = vpop.f32.mrf.mxu0
    %v706 = vadd.f32 %v134, %v705
    %v707 = vpop.f32.mrf.mxu0
    %v708 = vadd.f32 %v134, %v707
    %709 = vmatmul.bf16.gmra.mxu0 %v482
    %v710 = vpop.f32.mrf.mxu0
    %v711 = vadd.f32 %v134, %v710
    %v712 = vpop.f32.mrf.mxu0
    %713 = vdwg.mxu0
    %v714 = vmax.f32 %v501, 0.0
    %v715 = vmax.f32 %v503, 0.0
    %v716 = vmax.f32 %v506, 0.0
    %v717 = vmax.f32 %v508, 0.0
    %v718 = vmax.f32 %v511, 0.0
    %v719 = vmax.f32 %v513, 0.0
    %v720 = vmax.f32 %v516, 0.0
    %v721 = vmax.f32 %v518, 0.0
    %v722 = vmax.f32 %v521, 0.0
    %v723 = vmax.f32 %v523, 0.0
    %v724 = vmax.f32 %v526, 0.0
    %v725 = vmax.f32 %v528, 0.0
    %v726 = vmax.f32 %v531, 0.0
    %v727 = vmax.f32 %v533, 0.0
    %v728 = vmax.f32 %v536, 0.0
    %v729 = vmax.f32 %v538, 0.0
    %v730 = vmax.f32 %v541, 0.0
    %v731 = vmax.f32 %v543, 0.0
    %v732 = vmax.f32 %v546, 0.0
    %v733 = vmax.f32 %v548, 0.0
    %v734 = vmax.f32 %v551, 0.0
    %v735 = vmax.f32 %v553, 0.0
    %v736 = vmax.f32 %v556, 0.0
    %v737 = vmax.f32 %v558, 0.0
    %v738 = vmax.f32 %v561, 0.0
    %v739 = vmax.f32 %v563, 0.0
    %v740 = vmax.f32 %v566, 0.0
    %v741 = vmax.f32 %v568, 0.0
    %v742 = vmax.f32 %v571, 0.0
    %v743 = vmax.f32 %v573, 0.0
    %v744 = vmax.f32 %v576, 0.0
    %v745 = vmax.f32 %v578, 0.0
    %v746 = vmax.f32 %v581, 0.0
    %v747 = vmax.f32 %v583, 0.0
    %v748 = vmax.f32 %v586, 0.0
    %v749 = vmax.f32 %v588, 0.0
    %v750 = vmax.f32 %v591, 0.0
    %v751 = vmax.f32 %v593, 0.0
    %v752 = vmax.f32 %v596, 0.0
    %v753 = vmax.f32 %v598, 0.0
    %v754 = vmax.f32 %v601, 0.0
    %v755 = vmax.f32 %v603, 0.0
    %v756 = vmax.f32 %v606, 0.0
    %v757 = vmax.f32 %v608, 0.0
    %v758 = vmax.f32 %v611, 0.0
    %v759 = vmax.f32 %v613, 0.0
    %v760 = vmax.f32 %v616, 0.0
    %v761 = vmax.f32 %v618, 0.0
    %v762 = vmax.f32 %v621, 0.0
    %v763 = vmax.f32 %v623, 0.0
    %v764 = vmax.f32 %v626, 0.0
    %v765 = vmax.f32 %v628, 0.0
    %v766 = vmax.f32 %v631, 0.0
    %v767 = vmax.f32 %v633, 0.0
    %v768 = vmax.f32 %v636, 0.0
    %v769 = vmax.f32 %v638, 0.0
    %v770 = vmax.f32 %v641, 0.0
    %v771 = vmax.f32 %v643, 0.0
    %v772 = vmax.f32 %v646, 0.0
    %v773 = vmax.f32 %v648, 0.0
    %v774 = vmax.f32 %v651, 0.0
    %v775 = vmax.f32 %v653, 0.0
    %v776 = vmax.f32 %v656, 0.0
    %v777 = vmax.f32 %v658, 0.0
    %v778 = vmax.f32 %v661, 0.0
    %v779 = vmax.f32 %v663, 0.0
    %v780 = vmax.f32 %v666, 0.0
    %v781 = vmax.f32 %v668, 0.0
    %v782 = vmax.f32 %v671, 0.0
    %v783 = vmax.f32 %v673, 0.0
    %v784 = vmax.f32 %v676, 0.0
    %v785 = vmax.f32 %v678, 0.0
    %v786 = vmax.f32 %v681, 0.0
    %v787 = vmax.f32 %v683, 0.0
    %v788 = vmax.f32 %v686, 0.0
    %v789 = vmax.f32 %v688, 0.0
    %v790 = vmax.f32 %v691, 0.0
    %v791 = vmax.f32 %v693, 0.0
    %v792 = vmax.f32 %v696, 0.0
    %v793 = vmax.f32 %v698, 0.0
    %v794 = vmax.f32 %v701, 0.0
    %v795 = vmax.f32 %v703, 0.0
    %v796 = vmax.f32 %v706, 0.0
    %v797 = vmax.f32 %v708, 0.0
    %v798 = vmax.f32 %v711, 0.0
    %vm799 = vcmask 261120
    %800 = vst.msk [vmem:[%s3] sm:$0xff] %vm799, %v714
    %801 = vst.msk [vmem:[%s3 + $0x8] sm:$0xff] %vm799, %v715
    %802 = vst.msk [vmem:[%s3 + $0x10] sm:$0xff] %vm799, %v716
    %803 = vst.msk [vmem:[%s3 + $0x18] sm:$0xff] %vm799, %v717
    %804 = vst.msk [vmem:[%s3 + $0x20] sm:$0xff] %vm799, %v718
    %805 = vst.msk [vmem:[%s3 + $0x28] sm:$0xff] %vm799, %v719
    %806 = vst.msk [vmem:[%s3 + $0x30] sm:$0xff] %vm799, %v720
    %807 = vst.msk [vmem:[%s3 + $0x38] sm:$0xff] %vm799, %v721
    %808 = vst.msk [vmem:[%s3 + $0x40] sm:$0xff] %vm799, %v722
    %809 = vst.msk [vmem:[%s3 + $0x48] sm:$0xff] %vm799, %v723
    %810 = vst.msk [vmem:[%s3 + $0x50] sm:$0xff] %vm799, %v724
    %811 = vst.msk [vmem:[%s3 + $0x58] sm:$0xff] %vm799, %v725
    %812 = vst.msk [vmem:[%s3 + $0x60] sm:$0xff] %vm799, %v726
    %813 = vst.msk [vmem:[%s3 + $0x68] sm:$0xff] %vm799, %v727
    %814 = vst.msk [vmem:[%s3 + $0x70] sm:$0xff] %vm799, %v728
    %815 = vst.msk [vmem:[%s3 + $0x78] sm:$0xff] %vm799, %v729
    %816 = vst.msk [vmem:[%s3 + $0x80] sm:$0xff] %vm799, %v730
    %817 = vst.msk [vmem:[%s3 + $0x88] sm:$0xff] %vm799, %v731
    %818 = vst.msk [vmem:[%s3 + $0x90] sm:$0xff] %vm799, %v732
    %819 = vst.msk [vmem:[%s3 + $0x98] sm:$0xff] %vm799, %v733
    %820 = vst.msk [vmem:[%s3 + $0xa0] sm:$0xff] %vm799, %v734
    %821 = vst.msk [vmem:[%s3 + $0xa8] sm:$0xff] %vm799, %v735
    %822 = vst.msk [vmem:[%s3 + $0xb0] sm:$0xff] %vm799, %v736
    %823 = vst.msk [vmem:[%s3 + $0xb8] sm:$0xff] %vm799, %v737
    %824 = vst.msk [vmem:[%s3 + $0xc0] sm:$0xff] %vm799, %v738
    %825 = vst.msk [vmem:[%s3 + $0xc8] sm:$0xff] %vm799, %v739
    %826 = vst.msk [vmem:[%s3 + $0xd0] sm:$0xff] %vm799, %v740
    %827 = vst.msk [vmem:[%s3 + $0xd8] sm:$0xff] %vm799, %v741
    %828 = vst.msk [vmem:[%s3 + $0xe0] sm:$0xff] %vm799, %v742
    %829 = vst.msk [vmem:[%s3 + $0xe8] sm:$0xff] %vm799, %v743
    %830 = vst.msk [vmem:[%s3 + $0xf0] sm:$0xff] %vm799, %v744
    %831 = vst.msk [vmem:[%s3 + $0xf8] sm:$0xff] %vm799, %v745
    %832 = vst.msk [vmem:[%s3 + $0x100] sm:$0xff] %vm799, %v746
    %833 = vst.msk [vmem:[%s3 + $0x108] sm:$0xff] %vm799, %v747
    %834 = vst.msk [vmem:[%s3 + $0x110] sm:$0xff] %vm799, %v748
    %835 = vst.msk [vmem:[%s3 + $0x118] sm:$0xff] %vm799, %v749
    %836 = vst.msk [vmem:[%s3 + $0x120] sm:$0xff] %vm799, %v750
    %837 = vst.msk [vmem:[%s3 + $0x128] sm:$0xff] %vm799, %v751
    %838 = vst.msk [vmem:[%s3 + $0x130] sm:$0xff] %vm799, %v752
    %839 = vst.msk [vmem:[%s3 + $0x138] sm:$0xff] %vm799, %v753
    %840 = vst.msk [vmem:[%s3 + $0x140] sm:$0xff] %vm799, %v754
    %841 = vst.msk [vmem:[%s3 + $0x148] sm:$0xff] %vm799, %v755
    %842 = vst.msk [vmem:[%s3 + $0x150] sm:$0xff] %vm799, %v756
    %843 = vst.msk [vmem:[%s3 + $0x158] sm:$0xff] %vm799, %v757
    %844 = vst.msk [vmem:[%s3 + $0x160] sm:$0xff] %vm799, %v758
    %845 = vst.msk [vmem:[%s3 + $0x168] sm:$0xff] %vm799, %v759
    %846 = vst.msk [vmem:[%s3 + $0x170] sm:$0xff] %vm799, %v760
    %847 = vst.msk [vmem:[%s3 + $0x178] sm:$0xff] %vm799, %v761
    %848 = vst.msk [vmem:[%s3 + $0x180] sm:$0xff] %vm799, %v762
    %849 = vst.msk [vmem:[%s3 + $0x188] sm:$0xff] %vm799, %v763
    %850 = vst.msk [vmem:[%s3 + $0x190] sm:$0xff] %vm799, %v764
    %851 = vst.msk [vmem:[%s3 + $0x198] sm:$0xff] %vm799, %v765
    %852 = vst.msk [vmem:[%s3 + $0x1a0] sm:$0xff] %vm799, %v766
    %853 = vst.msk [vmem:[%s3 + $0x1a8] sm:$0xff] %vm799, %v767
    %854 = vst.msk [vmem:[%s3 + $0x1b0] sm:$0xff] %vm799, %v768
    %855 = vst.msk [vmem:[%s3 + $0x1b8] sm:$0xff] %vm799, %v769
    %856 = vst.msk [vmem:[%s3 + $0x1c0] sm:$0xff] %vm799, %v770
    %857 = vst.msk [vmem:[%s3 + $0x1c8] sm:$0xff] %vm799, %v771
    %858 = vst.msk [vmem:[%s3 + $0x1d0] sm:$0xff] %vm799, %v772
    %859 = vst.msk [vmem:[%s3 + $0x1d8] sm:$0xff] %vm799, %v773
    %860 = vst.msk [vmem:[%s3 + $0x1e0] sm:$0xff] %vm799, %v774
    %861 = vst.msk [vmem:[%s3 + $0x1e8] sm:$0xff] %vm799, %v775
    %862 = vst.msk [vmem:[%s3 + $0x1f0] sm:$0xff] %vm799, %v776
    %863 = vst.msk [vmem:[%s3 + $0x1f8] sm:$0xff] %vm799, %v777
    %864 = vst.msk [vmem:[%s3 + $0x200] sm:$0xff] %vm799, %v778
    %865 = vst.msk [vmem:[%s3 + $0x208] sm:$0xff] %vm799, %v779
    %866 = vst.msk [vmem:[%s3 + $0x210] sm:$0xff] %vm799, %v780
    %867 = vst.msk [vmem:[%s3 + $0x218] sm:$0xff] %vm799, %v781
    %868 = vst.msk [vmem:[%s3 + $0x220] sm:$0xff] %vm799, %v782
    %869 = vst.msk [vmem:[%s3 + $0x228] sm:$0xff] %vm799, %v783
    %870 = vst.msk [vmem:[%s3 + $0x230] sm:$0xff] %vm799, %v784
    %871 = vst.msk [vmem:[%s3 + $0x238] sm:$0xff] %vm799, %v785
    %872 = vst.msk [vmem:[%s3 + $0x240] sm:$0xff] %vm799, %v786
    %873 = vst.msk [vmem:[%s3 + $0x248] sm:$0xff] %vm799, %v787
    %874 = vst.msk [vmem:[%s3 + $0x250] sm:$0xff] %vm799, %v788
    %875 = vst.msk [vmem:[%s3 + $0x258] sm:$0xff] %vm799, %v789
    %876 = vst.msk [vmem:[%s3 + $0x260] sm:$0xff] %vm799, %v790
    %877 = vst.msk [vmem:[%s3 + $0x268] sm:$0xff] %vm799, %v791
    %878 = vst.msk [vmem:[%s3 + $0x270] sm:$0xff] %vm799, %v792
    %879 = vst.msk [vmem:[%s3 + $0x278] sm:$0xff] %vm799, %v793
    %880 = vst.msk [vmem:[%s3 + $0x280] sm:$0xff] %vm799, %v794
    %881 = vst.msk [vmem:[%s3 + $0x288] sm:$0xff] %vm799, %v795
    %882 = vst.msk [vmem:[%s3 + $0x290] sm:$0xff] %vm799, %v796
    %883 = vst.msk [vmem:[%s3 + $0x298] sm:$0xff] %vm799, %v797
    %vm884 = vcmask 257024
    %885 = vst.msk [vmem:[%s3 + $0x2a0] sm:$0xf] %vm884, %v798
    %s886 = scalar_lea.vmem %s0, 340
    %v887 = vld [vmem:[%s886] sm:$0xf]
    %v888 = vld [vmem:[%s886 + $0x4] sm:$0xf]
    %v889 = vld [vmem:[%s886 + $0x8] sm:$0xf]
    %v890 = vld [vmem:[%s886 + $0xc] sm:$0xf]
    %v891 = vld [vmem:[%s886 + $0x10] sm:$0xf]
    %v892 = vld [vmem:[%s886 + $0x14] sm:$0xf]
    %v893 = vld [vmem:[%s886 + $0x18] sm:$0xf]
    %v894 = vld [vmem:[%s886 + $0x1c] sm:$0xf]
    %v895 = vld [vmem:[%s886 + $0x20] sm:$0xf]
    %v896 = vld [vmem:[%s886 + $0x24] sm:$0xf]
    %v897 = vld [vmem:[%s886 + $0x28] sm:$0xf]
    %v898 = vld [vmem:[%s886 + $0x2c] sm:$0xf]
    %v899 = vld [vmem:[%s886 + $0x30] sm:$0xf]
    %v900 = vld [vmem:[%s886 + $0x34] sm:$0xf]
    %v901 = vld [vmem:[%s886 + $0x38] sm:$0xf]
    %v902 = vld [vmem:[%s886 + $0x3c] sm:$0xf]
    %v903 = vld [vmem:[%s886 + $0x40] sm:$0xf]
    %v904 = vld [vmem:[%s886 + $0x44] sm:$0xf]
    %v905 = vld [vmem:[%s886 + $0x48] sm:$0xf]
    %v906 = vld [vmem:[%s886 + $0x4c] sm:$0xf]
    %v907 = vld [vmem:[%s886 + $0x50] sm:$0xf]
    %v908 = vld [vmem:[%s886 + $0x54] sm:$0xf]
    %v909 = vld [vmem:[%s886 + $0x58] sm:$0xf]
    %v910 = vld [vmem:[%s886 + $0x5c] sm:$0xf]
    %v911 = vld [vmem:[%s886 + $0x60] sm:$0xf]
    %v912 = vld [vmem:[%s886 + $0x64] sm:$0xf]
    %v913 = vld [vmem:[%s886 + $0x68] sm:$0xf]
    %v914 = vld [vmem:[%s886 + $0x6c] sm:$0xf]
    %v915 = vld [vmem:[%s886 + $0x70] sm:$0xf]
    %v916 = vld [vmem:[%s886 + $0x74] sm:$0xf]
    %v917 = vld [vmem:[%s886 + $0x78] sm:$0xf]
    %v918 = vld [vmem:[%s886 + $0x7c] sm:$0xf]
    %v919 = vld [vmem:[%s886 + $0x80] sm:$0xf]
    %v920 = vld [vmem:[%s886 + $0x84] sm:$0xf]
    %v921 = vld [vmem:[%s886 + $0x88] sm:$0xf]
    %v922 = vld [vmem:[%s886 + $0x8c] sm:$0xf]
    %v923 = vld [vmem:[%s886 + $0x90] sm:$0xf]
    %v924 = vld [vmem:[%s886 + $0x94] sm:$0xf]
    %v925 = vld [vmem:[%s886 + $0x98] sm:$0xf]
    %v926 = vld [vmem:[%s886 + $0x9c] sm:$0xf]
    %v927 = vld [vmem:[%s886 + $0xa0] sm:$0xf]
    %v928 = vld [vmem:[%s886 + $0xa4] sm:$0xf]
    %v929 = vld [vmem:[%s886 + $0xa8] sm:$0xf]
    %v930 = vld [vmem:[%s886 + $0xac] sm:$0xf]
    %v931 = vld [vmem:[%s886 + $0xb0] sm:$0xf]
    %v932 = vld [vmem:[%s886 + $0xb4] sm:$0xf]
    %v933 = vld [vmem:[%s886 + $0xb8] sm:$0xf]
    %v934 = vld [vmem:[%s886 + $0xbc] sm:$0xf]
    %v935 = vld [vmem:[%s886 + $0xc0] sm:$0xf]
    %v936 = vld [vmem:[%s886 + $0xc4] sm:$0xf]
    %v937 = vld [vmem:[%s886 + $0xc8] sm:$0xf]
    %v938 = vld [vmem:[%s886 + $0xcc] sm:$0xf]
    %v939 = vld [vmem:[%s886 + $0xd0] sm:$0xf]
    %v940 = vld [vmem:[%s886 + $0xd4] sm:$0xf]
    %v941 = vld [vmem:[%s886 + $0xd8] sm:$0xf]
    %v942 = vld [vmem:[%s886 + $0xdc] sm:$0xf]
    %v943 = vld [vmem:[%s886 + $0xe0] sm:$0xf]
    %v944 = vld [vmem:[%s886 + $0xe4] sm:$0xf]
    %v945 = vld [vmem:[%s886 + $0xe8] sm:$0xf]
    %v946 = vld [vmem:[%s886 + $0xec] sm:$0xf]
    %v947 = vld [vmem:[%s886 + $0xf0] sm:$0xf]
    %v948 = vld [vmem:[%s886 + $0xf4] sm:$0xf]
    %v949 = vld [vmem:[%s886 + $0xf8] sm:$0xf]
    %v950 = vld [vmem:[%s886 + $0xfc] sm:$0xf]
    %v951 = vld [vmem:[%s886 + $0x100] sm:$0xf]
    %v952 = vld [vmem:[%s886 + $0x104] sm:$0xf]
    %v953 = vld [vmem:[%s886 + $0x108] sm:$0xf]
    %v954 = vld [vmem:[%s886 + $0x10c] sm:$0xf]
    %v955 = vld [vmem:[%s886 + $0x110] sm:$0xf]
    %v956 = vld [vmem:[%s886 + $0x114] sm:$0xf]
    %v957 = vld [vmem:[%s886 + $0x118] sm:$0xf]
    %v958 = vld [vmem:[%s886 + $0x11c] sm:$0xf]
    %v959 = vld [vmem:[%s886 + $0x120] sm:$0xf]
    %v960 = vld [vmem:[%s886 + $0x124] sm:$0xf]
    %v961 = vld [vmem:[%s886 + $0x128] sm:$0xf]
    %v962 = vld [vmem:[%s886 + $0x12c] sm:$0xf]
    %v963 = vld [vmem:[%s886 + $0x130] sm:$0xf]
    %v964 = vld [vmem:[%s886 + $0x134] sm:$0xf]
    %v965 = vld [vmem:[%s886 + $0x138] sm:$0xf]
    %v966 = vld [vmem:[%s886 + $0x13c] sm:$0xf]
    %v967 = vld [vmem:[%s886 + $0x140] sm:$0xf]
    %v968 = vld [vmem:[%s886 + $0x144] sm:$0xf]
    %v969 = vld [vmem:[%s886 + $0x148] sm:$0xf]
    %v970 = vld [vmem:[%s886 + $0x14c] sm:$0xf]
    %v971 = vld [vmem:[%s886 + $0x150] sm:$0x3]
    %v972 = vld [vmem:[#allocation2] sm:$0xf]
    %v973 = vld [vmem:[#allocation2 + $0x4] sm:$0x1]
    %v974 = vld [vmem:[#allocation4] sm:$0x1]
    %v976 = vperm.slane %v974, 0
    %v1063 = vunpack.c.l.b16 %v887
    %v1064 = vunpack.c.l.b16 %v888
    %v1065 = vunpack.c.l.b16 %v889
    %v1066 = vunpack.c.l.b16 %v890
    %v1067 = vunpack.c.l.b16 %v891
    %v1068 = vunpack.c.l.b16 %v892
    %v1069 = vunpack.c.l.b16 %v893
    %v1070 = vunpack.c.l.b16 %v894
    %v1071 = vunpack.c.l.b16 %v895
    %v1072 = vunpack.c.l.b16 %v896
    %v1073 = vunpack.c.l.b16 %v897
    %v1074 = vunpack.c.l.b16 %v898
    %v1075 = vunpack.c.l.b16 %v899
    %v1076 = vunpack.c.l.b16 %v900
    %v1077 = vunpack.c.l.b16 %v901
    %v1078 = vunpack.c.l.b16 %v902
    %v1079 = vunpack.c.l.b16 %v903
    %v1080 = vunpack.c.l.b16 %v904
    %v1081 = vunpack.c.l.b16 %v905
    %v1082 = vunpack.c.l.b16 %v906
    %v1083 = vunpack.c.l.b16 %v907
    %v1084 = vunpack.c.l.b16 %v908
    %v1085 = vunpack.c.l.b16 %v909
    %v1086 = vunpack.c.l.b16 %v910
    %v1087 = vunpack.c.l.b16 %v911
    %v1088 = vunpack.c.l.b16 %v912
    %v1089 = vunpack.c.l.b16 %v913
    %v1090 = vunpack.c.l.b16 %v914
    %v1091 = vunpack.c.l.b16 %v915
    %v1092 = vunpack.c.l.b16 %v916
    %v1093 = vunpack.c.l.b16 %v917
    %v1094 = vunpack.c.l.b16 %v918
    %v1095 = vunpack.c.l.b16 %v919
    %v1096 = vunpack.c.l.b16 %v920
    %v1097 = vunpack.c.l.b16 %v921
    %v1098 = vunpack.c.l.b16 %v922
    %v1099 = vunpack.c.l.b16 %v923
    %v1100 = vunpack.c.l.b16 %v924
    %v1101 = vunpack.c.l.b16 %v925
    %v1102 = vunpack.c.l.b16 %v926
    %v1103 = vunpack.c.l.b16 %v927
    %v1104 = vunpack.c.l.b16 %v928
    %v1105 = vunpack.c.l.b16 %v929
    %v1106 = vunpack.c.l.b16 %v930
    %v1107 = vunpack.c.l.b16 %v931
    %v1108 = vunpack.c.l.b16 %v932
    %v1109 = vunpack.c.l.b16 %v933
    %v1110 = vunpack.c.l.b16 %v934
    %v1111 = vunpack.c.l.b16 %v935
    %v1112 = vunpack.c.l.b16 %v936
    %v1113 = vunpack.c.l.b16 %v937
    %v1114 = vunpack.c.l.b16 %v938
    %v1115 = vunpack.c.l.b16 %v939
    %v1116 = vunpack.c.l.b16 %v940
    %v1117 = vunpack.c.l.b16 %v941
    %v1118 = vunpack.c.l.b16 %v942
    %v1119 = vunpack.c.l.b16 %v943
    %v1120 = vunpack.c.l.b16 %v944
    %v1121 = vunpack.c.l.b16 %v945
    %v1122 = vunpack.c.l.b16 %v946
    %v1123 = vunpack.c.l.b16 %v947
    %v1124 = vunpack.c.l.b16 %v948
    %v1125 = vunpack.c.l.b16 %v949
    %v1126 = vunpack.c.l.b16 %v950
    %v1127 = vunpack.c.l.b16 %v951
    %v1128 = vunpack.c.l.b16 %v952
    %v1129 = vunpack.c.l.b16 %v953
    %v1130 = vunpack.c.l.b16 %v954
    %v1131 = vunpack.c.l.b16 %v955
    %v1132 = vunpack.c.l.b16 %v956
    %v1133 = vunpack.c.l.b16 %v957
    %v1134 = vunpack.c.l.b16 %v958
    %v1135 = vunpack.c.l.b16 %v959
    %v1136 = vunpack.c.l.b16 %v960
    %v1137 = vunpack.c.l.b16 %v961
    %v1138 = vunpack.c.l.b16 %v962
    %v1139 = vunpack.c.l.b16 %v963
    %v1140 = vunpack.c.l.b16 %v964
    %v1141 = vunpack.c.l.b16 %v965
    %v1142 = vunpack.c.l.b16 %v966
    %v1143 = vunpack.c.l.b16 %v967
    %v1144 = vunpack.c.l.b16 %v968
    %v1145 = vunpack.c.l.b16 %v969
    %v1146 = vunpack.c.l.b16 %v970
    %v1147 = vunpack.c.l.b16 %v971
    %v1148 = vpack.c.b16 %v1064, %v1063
    %v1149 = vpack.c.b16 %v1066, %v1065
    %v1150 = vpack.c.b16 %v1068, %v1067
    %v1151 = vpack.c.b16 %v1070, %v1069
    %v1152 = vpack.c.b16 %v1072, %v1071
    %v1153 = vpack.c.b16 %v1074, %v1073
    %v1154 = vpack.c.b16 %v1076, %v1075
    %v1155 = vpack.c.b16 %v1078, %v1077
    %v1156 = vpack.c.b16 %v1080, %v1079
    %v1157 = vpack.c.b16 %v1082, %v1081
    %v1158 = vpack.c.b16 %v1084, %v1083
    %v1159 = vpack.c.b16 %v1086, %v1085
    %v1160 = vpack.c.b16 %v1088, %v1087
    %v1161 = vpack.c.b16 %v1090, %v1089
    %v1162 = vpack.c.b16 %v1092, %v1091
    %v1163 = vpack.c.b16 %v1094, %v1093
    %v1164 = vpack.c.b16 %v1096, %v1095
    %v1165 = vpack.c.b16 %v1098, %v1097
    %v1166 = vpack.c.b16 %v1100, %v1099
    %v1167 = vpack.c.b16 %v1102, %v1101
    %v1168 = vpack.c.b16 %v1104, %v1103
    %v1169 = vpack.c.b16 %v1106, %v1105
    %v1170 = vpack.c.b16 %v1108, %v1107
    %v1171 = vpack.c.b16 %v1110, %v1109
    %v1172 = vpack.c.b16 %v1112, %v1111
    %v1173 = vpack.c.b16 %v1114, %v1113
    %v1174 = vpack.c.b16 %v1116, %v1115
    %v1175 = vpack.c.b16 %v1118, %v1117
    %v1176 = vpack.c.b16 %v1120, %v1119
    %v1177 = vpack.c.b16 %v1122, %v1121
    %v1178 = vpack.c.b16 %v1124, %v1123
    %v1179 = vpack.c.b16 %v1126, %v1125
    %v1180 = vpack.c.b16 %v1128, %v1127
    %v1181 = vpack.c.b16 %v1130, %v1129
    %v1182 = vpack.c.b16 %v1132, %v1131
    %v1183 = vpack.c.b16 %v1134, %v1133
    %v1184 = vpack.c.b16 %v1136, %v1135
    %v1185 = vpack.c.b16 %v1138, %v1137
    %v1186 = vpack.c.b16 %v1140, %v1139
    %v1187 = vpack.c.b16 %v1142, %v1141
    %v1188 = vpack.c.b16 %v1144, %v1143
    %v1189 = vpack.c.b16 %v1146, %v1145
    %v1190 = vpack.c.b16 %v1147, %v1147
    %v1193 = vunpack.c.l.b16 %v972
    %v1194 = vunpack.c.l.b16 %v973
    %v1195 = vpack.c.b16 %v1194, %v1193
    %v1197 = vsel %vm354, %v1148, 0
    %v1200 = vsel %vm354, %v1149, 0
    %v1203 = vsel %vm354, %v1150, 0
    %v1206 = vsel %vm354, %v1151, 0
    %v1209 = vsel %vm354, %v1152, 0
    %v1212 = vsel %vm354, %v1153, 0
    %v1215 = vsel %vm354, %v1154, 0
    %v1218 = vsel %vm354, %v1155, 0
    %v1221 = vsel %vm354, %v1156, 0
    %v1224 = vsel %vm354, %v1157, 0
    %v1227 = vsel %vm354, %v1158, 0
    %v1230 = vsel %vm354, %v1159, 0
    %v1233 = vsel %vm354, %v1160, 0
    %v1236 = vsel %vm354, %v1161, 0
    %v1239 = vsel %vm354, %v1162, 0
    %v1242 = vsel %vm354, %v1163, 0
    %v1245 = vsel %vm354, %v1164, 0
    %v1248 = vsel %vm354, %v1165, 0
    %v1251 = vsel %vm354, %v1166, 0
    %v1254 = vsel %vm354, %v1167, 0
    %v1257 = vsel %vm354, %v1168, 0
    %v1260 = vsel %vm354, %v1169, 0
    %v1263 = vsel %vm354, %v1170, 0
    %v1266 = vsel %vm354, %v1171, 0
    %v1269 = vsel %vm354, %v1172, 0
    %v1272 = vsel %vm354, %v1173, 0
    %v1275 = vsel %vm354, %v1174, 0
    %v1278 = vsel %vm354, %v1175, 0
    %v1281 = vsel %vm354, %v1176, 0
    %v1284 = vsel %vm354, %v1177, 0
    %v1287 = vsel %vm354, %v1178, 0
    %v1290 = vsel %vm354, %v1179, 0
    %v1293 = vsel %vm354, %v1180, 0
    %v1296 = vsel %vm354, %v1181, 0
    %v1299 = vsel %vm354, %v1182, 0
    %v1302 = vsel %vm354, %v1183, 0
    %v1305 = vsel %vm354, %v1184, 0
    %v1308 = vsel %vm354, %v1185, 0
    %v1311 = vsel %vm354, %v1186, 0
    %v1314 = vsel %vm354, %v1187, 0
    %v1317 = vsel %vm354, %v1188, 0
    %v1320 = vsel %vm354, %v1189, 0
    %v1323 = vsel %vm354, %v1190, 0
    %v1326 = vand.u32 %v1195, %v487
    %1328 = vmatpush.bf16.msra.mxu0 0
    %1329 = vmatpush.bf16.msra.mxu0 0
    %1330 = vmatpush.bf16.msra.mxu0 0
    %1331 = vmatpush.bf16.msra.mxu0 0
    %1332 = vmatpush.bf16.msra.mxu0 0
    %1333 = vmatpush.bf16.msra.mxu0 0
    %1334 = vmatpush.bf16.msra.mxu0 0
    %1335 = vmatpush.bf16.msra.mxu0 %v1326
    %1336 = vmatmul.bf16.gmra.mxu0 %v1197
    %v1337 = vpop.f32.mrf.mxu0
    %v1338 = vadd.f32 %v976, %v1337
    %v1339 = vpop.f32.mrf.mxu0
    %v1340 = vadd.f32 %v976, %v1339
    %1341 = vmatmul.bf16.gmra.mxu0 %v1200
    %v1342 = vpop.f32.mrf.mxu0
    %v1343 = vadd.f32 %v976, %v1342
    %v1344 = vpop.f32.mrf.mxu0
    %v1345 = vadd.f32 %v976, %v1344
    %1346 = vmatmul.bf16.gmra.mxu0 %v1203
    %v1347 = vpop.f32.mrf.mxu0
    %v1348 = vadd.f32 %v976, %v1347
    %v1349 = vpop.f32.mrf.mxu0
    %v1350 = vadd.f32 %v976, %v1349
    %1351 = vmatmul.bf16.gmra.mxu0 %v1206
    %v1352 = vpop.f32.mrf.mxu0
    %v1353 = vadd.f32 %v976, %v1352
    %v1354 = vpop.f32.mrf.mxu0
    %v1355 = vadd.f32 %v976, %v1354
    %1356 = vmatmul.bf16.gmra.mxu0 %v1209
    %v1357 = vpop.f32.mrf.mxu0
    %v1358 = vadd.f32 %v976, %v1357
    %v1359 = vpop.f32.mrf.mxu0
    %v1360 = vadd.f32 %v976, %v1359
    %1361 = vmatmul.bf16.gmra.mxu0 %v1212
    %v1362 = vpop.f32.mrf.mxu0
    %v1363 = vadd.f32 %v976, %v1362
    %v1364 = vpop.f32.mrf.mxu0
    %v1365 = vadd.f32 %v976, %v1364
    %1366 = vmatmul.bf16.gmra.mxu0 %v1215
    %v1367 = vpop.f32.mrf.mxu0
    %v1368 = vadd.f32 %v976, %v1367
    %v1369 = vpop.f32.mrf.mxu0
    %v1370 = vadd.f32 %v976, %v1369
    %1371 = vmatmul.bf16.gmra.mxu0 %v1218
    %v1372 = vpop.f32.mrf.mxu0
    %v1373 = vadd.f32 %v976, %v1372
    %v1374 = vpop.f32.mrf.mxu0
    %v1375 = vadd.f32 %v976, %v1374
    %1376 = vmatmul.bf16.gmra.mxu0 %v1221
    %v1377 = vpop.f32.mrf.mxu0
    %v1378 = vadd.f32 %v976, %v1377
    %v1379 = vpop.f32.mrf.mxu0
    %v1380 = vadd.f32 %v976, %v1379
    %1381 = vmatmul.bf16.gmra.mxu0 %v1224
    %v1382 = vpop.f32.mrf.mxu0
    %v1383 = vadd.f32 %v976, %v1382
    %v1384 = vpop.f32.mrf.mxu0
    %v1385 = vadd.f32 %v976, %v1384
    %1386 = vmatmul.bf16.gmra.mxu0 %v1227
    %v1387 = vpop.f32.mrf.mxu0
    %v1388 = vadd.f32 %v976, %v1387
    %v1389 = vpop.f32.mrf.mxu0
    %v1390 = vadd.f32 %v976, %v1389
    %1391 = vmatmul.bf16.gmra.mxu0 %v1230
    %v1392 = vpop.f32.mrf.mxu0
    %v1393 = vadd.f32 %v976, %v1392
    %v1394 = vpop.f32.mrf.mxu0
    %v1395 = vadd.f32 %v976, %v1394
    %1396 = vmatmul.bf16.gmra.mxu0 %v1233
    %v1397 = vpop.f32.mrf.mxu0
    %v1398 = vadd.f32 %v976, %v1397
    %v1399 = vpop.f32.mrf.mxu0
    %v1400 = vadd.f32 %v976, %v1399
    %1401 = vmatmul.bf16.gmra.mxu0 %v1236
    %v1402 = vpop.f32.mrf.mxu0
    %v1403 = vadd.f32 %v976, %v1402
    %v1404 = vpop.f32.mrf.mxu0
    %v1405 = vadd.f32 %v976, %v1404
    %1406 = vmatmul.bf16.gmra.mxu0 %v1239
    %v1407 = vpop.f32.mrf.mxu0
    %v1408 = vadd.f32 %v976, %v1407
    %v1409 = vpop.f32.mrf.mxu0
    %v1410 = vadd.f32 %v976, %v1409
    %1411 = vmatmul.bf16.gmra.mxu0 %v1242
    %v1412 = vpop.f32.mrf.mxu0
    %v1413 = vadd.f32 %v976, %v1412
    %v1414 = vpop.f32.mrf.mxu0
    %v1415 = vadd.f32 %v976, %v1414
    %1416 = vmatmul.bf16.gmra.mxu0 %v1245
    %v1417 = vpop.f32.mrf.mxu0
    %v1418 = vadd.f32 %v976, %v1417
    %v1419 = vpop.f32.mrf.mxu0
    %v1420 = vadd.f32 %v976, %v1419
    %1421 = vmatmul.bf16.gmra.mxu0 %v1248
    %v1422 = vpop.f32.mrf.mxu0
    %v1423 = vadd.f32 %v976, %v1422
    %v1424 = vpop.f32.mrf.mxu0
    %v1425 = vadd.f32 %v976, %v1424
    %1426 = vmatmul.bf16.gmra.mxu0 %v1251
    %v1427 = vpop.f32.mrf.mxu0
    %v1428 = vadd.f32 %v976, %v1427
    %v1429 = vpop.f32.mrf.mxu0
    %v1430 = vadd.f32 %v976, %v1429
    %1431 = vmatmul.bf16.gmra.mxu0 %v1254
    %v1432 = vpop.f32.mrf.mxu0
    %v1433 = vadd.f32 %v976, %v1432
    %v1434 = vpop.f32.mrf.mxu0
    %v1435 = vadd.f32 %v976, %v1434
    %1436 = vmatmul.bf16.gmra.mxu0 %v1257
    %v1437 = vpop.f32.mrf.mxu0
    %v1438 = vadd.f32 %v976, %v1437
    %v1439 = vpop.f32.mrf.mxu0
    %v1440 = vadd.f32 %v976, %v1439
    %1441 = vmatmul.bf16.gmra.mxu0 %v1260
    %v1442 = vpop.f32.mrf.mxu0
    %v1443 = vadd.f32 %v976, %v1442
    %v1444 = vpop.f32.mrf.mxu0
    %v1445 = vadd.f32 %v976, %v1444
    %1446 = vmatmul.bf16.gmra.mxu0 %v1263
    %v1447 = vpop.f32.mrf.mxu0
    %v1448 = vadd.f32 %v976, %v1447
    %v1449 = vpop.f32.mrf.mxu0
    %v1450 = vadd.f32 %v976, %v1449
    %1451 = vmatmul.bf16.gmra.mxu0 %v1266
    %v1452 = vpop.f32.mrf.mxu0
    %v1453 = vadd.f32 %v976, %v1452
    %v1454 = vpop.f32.mrf.mxu0
    %v1455 = vadd.f32 %v976, %v1454
    %1456 = vmatmul.bf16.gmra.mxu0 %v1269
    %v1457 = vpop.f32.mrf.mxu0
    %v1458 = vadd.f32 %v976, %v1457
    %v1459 = vpop.f32.mrf.mxu0
    %v1460 = vadd.f32 %v976, %v1459
    %1461 = vmatmul.bf16.gmra.mxu0 %v1272
    %v1462 = vpop.f32.mrf.mxu0
    %v1463 = vadd.f32 %v976, %v1462
    %v1464 = vpop.f32.mrf.mxu0
    %v1465 = vadd.f32 %v976, %v1464
    %1466 = vmatmul.bf16.gmra.mxu0 %v1275
    %v1467 = vpop.f32.mrf.mxu0
    %v1468 = vadd.f32 %v976, %v1467
    %v1469 = vpop.f32.mrf.mxu0
    %v1470 = vadd.f32 %v976, %v1469
    %1471 = vmatmul.bf16.gmra.mxu0 %v1278
    %v1472 = vpop.f32.mrf.mxu0
    %v1473 = vadd.f32 %v976, %v1472
    %v1474 = vpop.f32.mrf.mxu0
    %v1475 = vadd.f32 %v976, %v1474
    %1476 = vmatmul.bf16.gmra.mxu0 %v1281
    %v1477 = vpop.f32.mrf.mxu0
    %v1478 = vadd.f32 %v976, %v1477
    %v1479 = vpop.f32.mrf.mxu0
    %v1480 = vadd.f32 %v976, %v1479
    %1481 = vmatmul.bf16.gmra.mxu0 %v1284
    %v1482 = vpop.f32.mrf.mxu0
    %v1483 = vadd.f32 %v976, %v1482
    %v1484 = vpop.f32.mrf.mxu0
    %v1485 = vadd.f32 %v976, %v1484
    %1486 = vmatmul.bf16.gmra.mxu0 %v1287
    %v1487 = vpop.f32.mrf.mxu0
    %v1488 = vadd.f32 %v976, %v1487
    %v1489 = vpop.f32.mrf.mxu0
    %v1490 = vadd.f32 %v976, %v1489
    %1491 = vmatmul.bf16.gmra.mxu0 %v1290
    %v1492 = vpop.f32.mrf.mxu0
    %v1493 = vadd.f32 %v976, %v1492
    %v1494 = vpop.f32.mrf.mxu0
    %v1495 = vadd.f32 %v976, %v1494
    %1496 = vmatmul.bf16.gmra.mxu0 %v1293
    %v1497 = vpop.f32.mrf.mxu0
    %v1498 = vadd.f32 %v976, %v1497
    %v1499 = vpop.f32.mrf.mxu0
    %v1500 = vadd.f32 %v976, %v1499
    %1501 = vmatmul.bf16.gmra.mxu0 %v1296
    %v1502 = vpop.f32.mrf.mxu0
    %v1503 = vadd.f32 %v976, %v1502
    %v1504 = vpop.f32.mrf.mxu0
    %v1505 = vadd.f32 %v976, %v1504
    %1506 = vmatmul.bf16.gmra.mxu0 %v1299
    %v1507 = vpop.f32.mrf.mxu0
    %v1508 = vadd.f32 %v976, %v1507
    %v1509 = vpop.f32.mrf.mxu0
    %v1510 = vadd.f32 %v976, %v1509
    %1511 = vmatmul.bf16.gmra.mxu0 %v1302
    %v1512 = vpop.f32.mrf.mxu0
    %v1513 = vadd.f32 %v976, %v1512
    %v1514 = vpop.f32.mrf.mxu0
    %v1515 = vadd.f32 %v976, %v1514
    %1516 = vmatmul.bf16.gmra.mxu0 %v1305
    %v1517 = vpop.f32.mrf.mxu0
    %v1518 = vadd.f32 %v976, %v1517
    %v1519 = vpop.f32.mrf.mxu0
    %v1520 = vadd.f32 %v976, %v1519
    %1521 = vmatmul.bf16.gmra.mxu0 %v1308
    %v1522 = vpop.f32.mrf.mxu0
    %v1523 = vadd.f32 %v976, %v1522
    %v1524 = vpop.f32.mrf.mxu0
    %v1525 = vadd.f32 %v976, %v1524
    %1526 = vmatmul.bf16.gmra.mxu0 %v1311
    %v1527 = vpop.f32.mrf.mxu0
    %v1528 = vadd.f32 %v976, %v1527
    %v1529 = vpop.f32.mrf.mxu0
    %v1530 = vadd.f32 %v976, %v1529
    %1531 = vmatmul.bf16.gmra.mxu0 %v1314
    %v1532 = vpop.f32.mrf.mxu0
    %v1533 = vadd.f32 %v976, %v1532
    %v1534 = vpop.f32.mrf.mxu0
    %v1535 = vadd.f32 %v976, %v1534
    %1536 = vmatmul.bf16.gmra.mxu0 %v1317
    %v1537 = vpop.f32.mrf.mxu0
    %v1538 = vadd.f32 %v976, %v1537
    %v1539 = vpop.f32.mrf.mxu0
    %v1540 = vadd.f32 %v976, %v1539
    %1541 = vmatmul.bf16.gmra.mxu0 %v1320
    %v1542 = vpop.f32.mrf.mxu0
    %v1543 = vadd.f32 %v976, %v1542
    %v1544 = vpop.f32.mrf.mxu0
    %v1545 = vadd.f32 %v976, %v1544
    %1546 = vmatmul.bf16.gmra.mxu0 %v1323
    %v1547 = vpop.f32.mrf.mxu0
    %v1548 = vadd.f32 %v976, %v1547
    %v1549 = vpop.f32.mrf.mxu0
    %1550 = vdwg.mxu0
    %v1551 = vmax.f32 %v1338, 0.0
    %v1552 = vmax.f32 %v1340, 0.0
    %v1553 = vmax.f32 %v1343, 0.0
    %v1554 = vmax.f32 %v1345, 0.0
    %v1555 = vmax.f32 %v1348, 0.0
    %v1556 = vmax.f32 %v1350, 0.0
    %v1557 = vmax.f32 %v1353, 0.0
    %v1558 = vmax.f32 %v1355, 0.0
    %v1559 = vmax.f32 %v1358, 0.0
    %v1560 = vmax.f32 %v1360, 0.0
    %v1561 = vmax.f32 %v1363, 0.0
    %v1562 = vmax.f32 %v1365, 0.0
    %v1563 = vmax.f32 %v1368, 0.0
    %v1564 = vmax.f32 %v1370, 0.0
    %v1565 = vmax.f32 %v1373, 0.0
    %v1566 = vmax.f32 %v1375, 0.0
    %v1567 = vmax.f32 %v1378, 0.0
    %v1568 = vmax.f32 %v1380, 0.0
    %v1569 = vmax.f32 %v1383, 0.0
    %v1570 = vmax.f32 %v1385, 0.0
    %v1571 = vmax.f32 %v1388, 0.0
    %v1572 = vmax.f32 %v1390, 0.0
    %v1573 = vmax.f32 %v1393, 0.0
    %v1574 = vmax.f32 %v1395, 0.0
    %v1575 = vmax.f32 %v1398, 0.0
    %v1576 = vmax.f32 %v1400, 0.0
    %v1577 = vmax.f32 %v1403, 0.0
    %v1578 = vmax.f32 %v1405, 0.0
    %v1579 = vmax.f32 %v1408, 0.0
    %v1580 = vmax.f32 %v1410, 0.0
    %v1581 = vmax.f32 %v1413, 0.0
    %v1582 = vmax.f32 %v1415, 0.0
    %v1583 = vmax.f32 %v1418, 0.0
    %v1584 = vmax.f32 %v1420, 0.0
    %v1585 = vmax.f32 %v1423, 0.0
    %v1586 = vmax.f32 %v1425, 0.0
    %v1587 = vmax.f32 %v1428, 0.0
    %v1588 = vmax.f32 %v1430, 0.0
    %v1589 = vmax.f32 %v1433, 0.0
    %v1590 = vmax.f32 %v1435, 0.0
    %v1591 = vmax.f32 %v1438, 0.0
    %v1592 = vmax.f32 %v1440, 0.0
    %v1593 = vmax.f32 %v1443, 0.0
    %v1594 = vmax.f32 %v1445, 0.0
    %v1595 = vmax.f32 %v1448, 0.0
    %v1596 = vmax.f32 %v1450, 0.0
    %v1597 = vmax.f32 %v1453, 0.0
    %v1598 = vmax.f32 %v1455, 0.0
    %v1599 = vmax.f32 %v1458, 0.0
    %v1600 = vmax.f32 %v1460, 0.0
    %v1601 = vmax.f32 %v1463, 0.0
    %v1602 = vmax.f32 %v1465, 0.0
    %v1603 = vmax.f32 %v1468, 0.0
    %v1604 = vmax.f32 %v1470, 0.0
    %v1605 = vmax.f32 %v1473, 0.0
    %v1606 = vmax.f32 %v1475, 0.0
    %v1607 = vmax.f32 %v1478, 0.0
    %v1608 = vmax.f32 %v1480, 0.0
    %v1609 = vmax.f32 %v1483, 0.0
    %v1610 = vmax.f32 %v1485, 0.0
    %v1611 = vmax.f32 %v1488, 0.0
    %v1612 = vmax.f32 %v1490, 0.0
    %v1613 = vmax.f32 %v1493, 0.0
    %v1614 = vmax.f32 %v1495, 0.0
    %v1615 = vmax.f32 %v1498, 0.0
    %v1616 = vmax.f32 %v1500, 0.0
    %v1617 = vmax.f32 %v1503, 0.0
    %v1618 = vmax.f32 %v1505, 0.0
    %v1619 = vmax.f32 %v1508, 0.0
    %v1620 = vmax.f32 %v1510, 0.0
    %v1621 = vmax.f32 %v1513, 0.0
    %v1622 = vmax.f32 %v1515, 0.0
    %v1623 = vmax.f32 %v1518, 0.0
    %v1624 = vmax.f32 %v1520, 0.0
    %v1625 = vmax.f32 %v1523, 0.0
    %v1626 = vmax.f32 %v1525, 0.0
    %v1627 = vmax.f32 %v1528, 0.0
    %v1628 = vmax.f32 %v1530, 0.0
    %v1629 = vmax.f32 %v1533, 0.0
    %v1630 = vmax.f32 %v1535, 0.0
    %v1631 = vmax.f32 %v1538, 0.0
    %v1632 = vmax.f32 %v1540, 0.0
    %v1633 = vmax.f32 %v1543, 0.0
    %v1634 = vmax.f32 %v1545, 0.0
    %v1635 = vmax.f32 %v1548, 0.0
    %s1636 = scalar_lea.vmem %s3, 680
    %1637 = vst.msk [vmem:[%s1636] sm:$0xff] %vm799, %v1551
    %1638 = vst.msk [vmem:[%s1636 + $0x8] sm:$0xff] %vm799, %v1552
    %1639 = vst.msk [vmem:[%s1636 + $0x10] sm:$0xff] %vm799, %v1553
    %1640 = vst.msk [vmem:[%s1636 + $0x18] sm:$0xff] %vm799, %v1554
    %1641 = vst.msk [vmem:[%s1636 + $0x20] sm:$0xff] %vm799, %v1555
    %1642 = vst.msk [vmem:[%s1636 + $0x28] sm:$0xff] %vm799, %v1556
    %1643 = vst.msk [vmem:[%s1636 + $0x30] sm:$0xff] %vm799, %v1557
    %1644 = vst.msk [vmem:[%s1636 + $0x38] sm:$0xff] %vm799, %v1558
    %1645 = vst.msk [vmem:[%s1636 + $0x40] sm:$0xff] %vm799, %v1559
    %1646 = vst.msk [vmem:[%s1636 + $0x48] sm:$0xff] %vm799, %v1560
    %1647 = vst.msk [vmem:[%s1636 + $0x50] sm:$0xff] %vm799, %v1561
    %1648 = vst.msk [vmem:[%s1636 + $0x58] sm:$0xff] %vm799, %v1562
    %1649 = vst.msk [vmem:[%s1636 + $0x60] sm:$0xff] %vm799, %v1563
    %1650 = vst.msk [vmem:[%s1636 + $0x68] sm:$0xff] %vm799, %v1564
    %1651 = vst.msk [vmem:[%s1636 + $0x70] sm:$0xff] %vm799, %v1565
    %1652 = vst.msk [vmem:[%s1636 + $0x78] sm:$0xff] %vm799, %v1566
    %1653 = vst.msk [vmem:[%s1636 + $0x80] sm:$0xff] %vm799, %v1567
    %1654 = vst.msk [vmem:[%s1636 + $0x88] sm:$0xff] %vm799, %v1568
    %1655 = vst.msk [vmem:[%s1636 + $0x90] sm:$0xff] %vm799, %v1569
    %1656 = vst.msk [vmem:[%s1636 + $0x98] sm:$0xff] %vm799, %v1570
    %1657 = vst.msk [vmem:[%s1636 + $0xa0] sm:$0xff] %vm799, %v1571
    %1658 = vst.msk [vmem:[%s1636 + $0xa8] sm:$0xff] %vm799, %v1572
    %1659 = vst.msk [vmem:[%s1636 + $0xb0] sm:$0xff] %vm799, %v1573
    %1660 = vst.msk [vmem:[%s1636 + $0xb8] sm:$0xff] %vm799, %v1574
    %1661 = vst.msk [vmem:[%s1636 + $0xc0] sm:$0xff] %vm799, %v1575
    %1662 = vst.msk [vmem:[%s1636 + $0xc8] sm:$0xff] %vm799, %v1576
    %1663 = vst.msk [vmem:[%s1636 + $0xd0] sm:$0xff] %vm799, %v1577
    %1664 = vst.msk [vmem:[%s1636 + $0xd8] sm:$0xff] %vm799, %v1578
    %1665 = vst.msk [vmem:[%s1636 + $0xe0] sm:$0xff] %vm799, %v1579
    %1666 = vst.msk [vmem:[%s1636 + $0xe8] sm:$0xff] %vm799, %v1580
    %1667 = vst.msk [vmem:[%s1636 + $0xf0] sm:$0xff] %vm799, %v1581
    %1668 = vst.msk [vmem:[%s1636 + $0xf8] sm:$0xff] %vm799, %v1582
    %1669 = vst.msk [vmem:[%s1636 + $0x100] sm:$0xff] %vm799, %v1583
    %1670 = vst.msk [vmem:[%s1636 + $0x108] sm:$0xff] %vm799, %v1584
    %1671 = vst.msk [vmem:[%s1636 + $0x110] sm:$0xff] %vm799, %v1585
    %1672 = vst.msk [vmem:[%s1636 + $0x118] sm:$0xff] %vm799, %v1586
    %1673 = vst.msk [vmem:[%s1636 + $0x120] sm:$0xff] %vm799, %v1587
    %1674 = vst.msk [vmem:[%s1636 + $0x128] sm:$0xff] %vm799, %v1588
    %1675 = vst.msk [vmem:[%s1636 + $0x130] sm:$0xff] %vm799, %v1589
    %1676 = vst.msk [vmem:[%s1636 + $0x138] sm:$0xff] %vm799, %v1590
    %1677 = vst.msk [vmem:[%s1636 + $0x140] sm:$0xff] %vm799, %v1591
    %1678 = vst.msk [vmem:[%s1636 + $0x148] sm:$0xff] %vm799, %v1592
    %1679 = vst.msk [vmem:[%s1636 + $0x150] sm:$0xff] %vm799, %v1593
    %1680 = vst.msk [vmem:[%s1636 + $0x158] sm:$0xff] %vm799, %v1594
    %1681 = vst.msk [vmem:[%s1636 + $0x160] sm:$0xff] %vm799, %v1595
    %1682 = vst.msk [vmem:[%s1636 + $0x168] sm:$0xff] %vm799, %v1596
    %1683 = vst.msk [vmem:[%s1636 + $0x170] sm:$0xff] %vm799, %v1597
    %1684 = vst.msk [vmem:[%s1636 + $0x178] sm:$0xff] %vm799, %v1598
    %1685 = vst.msk [vmem:[%s1636 + $0x180] sm:$0xff] %vm799, %v1599
    %1686 = vst.msk [vmem:[%s1636 + $0x188] sm:$0xff] %vm799, %v1600
    %1687 = vst.msk [vmem:[%s1636 + $0x190] sm:$0xff] %vm799, %v1601
    %1688 = vst.msk [vmem:[%s1636 + $0x198] sm:$0xff] %vm799, %v1602
    %1689 = vst.msk [vmem:[%s1636 + $0x1a0] sm:$0xff] %vm799, %v1603
    %1690 = vst.msk [vmem:[%s1636 + $0x1a8] sm:$0xff] %vm799, %v1604
    %1691 = vst.msk [vmem:[%s1636 + $0x1b0] sm:$0xff] %vm799, %v1605
    %1692 = vst.msk [vmem:[%s1636 + $0x1b8] sm:$0xff] %vm799, %v1606
    %1693 = vst.msk [vmem:[%s1636 + $0x1c0] sm:$0xff] %vm799, %v1607
    %1694 = vst.msk [vmem:[%s1636 + $0x1c8] sm:$0xff] %vm799, %v1608
    %1695 = vst.msk [vmem:[%s1636 + $0x1d0] sm:$0xff] %vm799, %v1609
    %1696 = vst.msk [vmem:[%s1636 + $0x1d8] sm:$0xff] %vm799, %v1610
    %1697 = vst.msk [vmem:[%s1636 + $0x1e0] sm:$0xff] %vm799, %v1611
    %1698 = vst.msk [vmem:[%s1636 + $0x1e8] sm:$0xff] %vm799, %v1612
    %1699 = vst.msk [vmem:[%s1636 + $0x1f0] sm:$0xff] %vm799, %v1613
    %1700 = vst.msk [vmem:[%s1636 + $0x1f8] sm:$0xff] %vm799, %v1614
    %1701 = vst.msk [vmem:[%s1636 + $0x200] sm:$0xff] %vm799, %v1615
    %1702 = vst.msk [vmem:[%s1636 + $0x208] sm:$0xff] %vm799, %v1616
    %1703 = vst.msk [vmem:[%s1636 + $0x210] sm:$0xff] %vm799, %v1617
    %1704 = vst.msk [vmem:[%s1636 + $0x218] sm:$0xff] %vm799, %v1618
    %1705 = vst.msk [vmem:[%s1636 + $0x220] sm:$0xff] %vm799, %v1619
    %1706 = vst.msk [vmem:[%s1636 + $0x228] sm:$0xff] %vm799, %v1620
    %1707 = vst.msk [vmem:[%s1636 + $0x230] sm:$0xff] %vm799, %v1621
    %1708 = vst.msk [vmem:[%s1636 + $0x238] sm:$0xff] %vm799, %v1622
    %1709 = vst.msk [vmem:[%s1636 + $0x240] sm:$0xff] %vm799, %v1623
    %1710 = vst.msk [vmem:[%s1636 + $0x248] sm:$0xff] %vm799, %v1624
    %1711 = vst.msk [vmem:[%s1636 + $0x250] sm:$0xff] %vm799, %v1625
    %1712 = vst.msk [vmem:[%s1636 + $0x258] sm:$0xff] %vm799, %v1626
    %1713 = vst.msk [vmem:[%s1636 + $0x260] sm:$0xff] %vm799, %v1627
    %1714 = vst.msk [vmem:[%s1636 + $0x268] sm:$0xff] %vm799, %v1628
    %1715 = vst.msk [vmem:[%s1636 + $0x270] sm:$0xff] %vm799, %v1629
    %1716 = vst.msk [vmem:[%s1636 + $0x278] sm:$0xff] %vm799, %v1630
    %1717 = vst.msk [vmem:[%s1636 + $0x280] sm:$0xff] %vm799, %v1631
    %1718 = vst.msk [vmem:[%s1636 + $0x288] sm:$0xff] %vm799, %v1632
    %1719 = vst.msk [vmem:[%s1636 + $0x290] sm:$0xff] %vm799, %v1633
    %1720 = vst.msk [vmem:[%s1636 + $0x298] sm:$0xff] %vm799, %v1634
    %1721 = vst.msk [vmem:[%s1636 + $0x2a0] sm:$0xf] %vm884, %v1635
    // Predicated region
    $region22: #{net_forward.3} parent=1 // pred_check
      _
    $region23: #{net_forward.3} parent=1 // pred_check_branch
      %1723 = sbr.rel (0) target = $region25
    $region24: #{net_forward.3} parent=1 // pred_region
      _
    $region25: #{net_forward.3} parent=1 // pred_fallthru
      _
    // Predicated region
    $region26: #{net_forward.3} parent=1 // pred_check
      _
    $region27: #{net_forward.3} parent=1 // pred_check_branch
      %1725 = sbr.rel (0) target = $region29
    $region28: #{net_forward.3} parent=1 // pred_region
      _
    $region29: #{net_forward.3} parent=1 // pred_fallthru
      _
    %1726 = vsyncpa [#allocation3], 1
    %1727 = vsyncpa [#allocation5], 1

// kernel: net_forward.4
$region0: #{net_forward.4}
  #allocation0 [shape = 'u32[]', space=smem, size = 0x4, offset = 0x4, fixed_abs, tag = 'smem constant byte address 0x4 - core index']
  #allocation1 [shape = 'u32[72,128]{1,0:T(1,128)}', space=vmem, size = 0x9000, scoped, tag = 'internal scratch']
  %s0 = inlined_call_operand.vmem [shape: f32[2,26,26,32], index: 0, kind: input, shape index: {}]
  %s1 = inlined_call_operand.vmem [shape: bf16[9,32,64], index: 1, kind: input, shape index: {}]
  %s2 = inlined_call_operand.vmem [shape: f32[1,64], index: 2, kind: input, shape index: {}]
  %s3 = inlined_call_operand.vmem [shape: bf16[2,576,64], index: 3, kind: output, shape index: {}]
  %s4 = sld [smem:[#allocation0]]
  $region22: #{net_forward.4} parent=0
    _
  %s6 = ssub.s32 1, %s4
  %s7 = scalar_select 0, %s6, %s4
  // Predicated region
  $region2: #{net_forward.4} parent=0 // pred_check
    _
  $region3: #{net_forward.4} parent=0 // pred_check_branch
    %9 = sbr.rel (0) target = $region5
  $region4: #{net_forward.4} parent=0 // pred_region
    _
  $region5: #{net_forward.4} parent=0 // pred_fallthru
    _
  // Predicated region
  $region6: #{net_forward.4} parent=0 // pred_check
    _
  $region7: #{net_forward.4} parent=0 // pred_check_branch
    %11 = sbr.rel (0) target = $region9
  $region8: #{net_forward.4} parent=0 // pred_region
    _
  $region9: #{net_forward.4} parent=0 // pred_fallthru
    _
  // Predicated region
  $region10: #{net_forward.4} parent=0 // pred_check
    _
  $region11: #{net_forward.4} parent=0 // pred_check_branch
    %13 = sbr.rel (0) target = $region13
  $region12: #{net_forward.4} parent=0 // pred_region
    _
  $region13: #{net_forward.4} parent=0 // pred_fallthru
    _
  %v15 = vld [vmem:[%s0] sm:$0xff]
  %v16 = vld [vmem:[%s0 + $0x8] sm:$0xff]
  %v17 = vld [vmem:[%s0 + $0x10] sm:$0xff]
  %v18 = vld [vmem:[%s0 + $0x20] sm:$0xff]
  %v19 = vld [vmem:[%s0 + $0x28] sm:$0xff]
  %v20 = vld [vmem:[%s0 + $0x30] sm:$0xff]
  %v21 = vld [vmem:[%s0 + $0x40] sm:$0xff]
  %v22 = vld [vmem:[%s0 + $0x48] sm:$0xff]
  %v23 = vld [vmem:[%s0 + $0x50] sm:$0xff]
  %v24 = vld [vmem:[%s0 + $0x60] sm:$0xff]
  %v25 = vld [vmem:[%s0 + $0x68] sm:$0xff]
  %v26 = vld [vmem:[%s0 + $0x70] sm:$0xff]
  %v27 = vld [vmem:[%s0 + $0x80] sm:$0xff]
  %v28 = vld [vmem:[%s0 + $0x88] sm:$0xff]
  %v29 = vld [vmem:[%s0 + $0x90] sm:$0xff]
  %v30 = vld [vmem:[%s0 + $0xa0] sm:$0xff]
  %v31 = vld [vmem:[%s0 + $0xa8] sm:$0xff]
  %v32 = vld [vmem:[%s0 + $0xb0] sm:$0xff]
  %v33 = vld [vmem:[%s0 + $0xc0] sm:$0xff]
  %v34 = vld [vmem:[%s0 + $0xc8] sm:$0xff]
  %v35 = vld [vmem:[%s0 + $0xd0] sm:$0xff]
  %v36 = vld [vmem:[%s0 + $0xe0] sm:$0xff]
  %v37 = vld [vmem:[%s0 + $0xe8] sm:$0xff]
  %v38 = vld [vmem:[%s0 + $0xf0] sm:$0xff]
  %v39 = vld [vmem:[%s0 + $0x100] sm:$0xff]
  %v40 = vld [vmem:[%s0 + $0x108] sm:$0xff]
  %v41 = vld [vmem:[%s0 + $0x110] sm:$0xff]
  %v42 = vld [vmem:[%s0 + $0x120] sm:$0xff]
  %v43 = vld [vmem:[%s0 + $0x128] sm:$0xff]
  %v44 = vld [vmem:[%s0 + $0x130] sm:$0xff]
  %v45 = vld [vmem:[%s0 + $0x140] sm:$0xff]
  %v46 = vld [vmem:[%s0 + $0x148] sm:$0xff]
  %v47 = vld [vmem:[%s0 + $0x150] sm:$0xff]
  %v48 = vld [vmem:[%s0 + $0x160] sm:$0xff]
  %v49 = vld [vmem:[%s0 + $0x168] sm:$0xff]
  %v50 = vld [vmem:[%s0 + $0x170] sm:$0xff]
  %v51 = vld [vmem:[%s0 + $0x180] sm:$0xff]
  %v52 = vld [vmem:[%s0 + $0x188] sm:$0xff]
  %v53 = vld [vmem:[%s0 + $0x190] sm:$0xff]
  %v54 = vld [vmem:[%s0 + $0x1a0] sm:$0xff]
  %v55 = vld [vmem:[%s0 + $0x1a8] sm:$0xff]
  %v56 = vld [vmem:[%s0 + $0x1b0] sm:$0xff]
  %v57 = vld [vmem:[%s0 + $0x1c0] sm:$0xff]
  %v58 = vld [vmem:[%s0 + $0x1c8] sm:$0xff]
  %v59 = vld [vmem:[%s0 + $0x1d0] sm:$0xff]
  %v60 = vld [vmem:[%s0 + $0x1e0] sm:$0xff]
  %v61 = vld [vmem:[%s0 + $0x1e8] sm:$0xff]
  %v62 = vld [vmem:[%s0 + $0x1f0] sm:$0xff]
  %v63 = vld [vmem:[%s0 + $0x200] sm:$0xff]
  %v64 = vld [vmem:[%s0 + $0x208] sm:$0xff]
  %v65 = vld [vmem:[%s0 + $0x210] sm:$0xff]
  %v66 = vld [vmem:[%s0 + $0x220] sm:$0xff]
  %v67 = vld [vmem:[%s0 + $0x228] sm:$0xff]
  %v68 = vld [vmem:[%s0 + $0x230] sm:$0xff]
  %v69 = vld [vmem:[%s0 + $0x240] sm:$0xff]
  %v70 = vld [vmem:[%s0 + $0x248] sm:$0xff]
  %v71 = vld [vmem:[%s0 + $0x250] sm:$0xff]
  %v72 = vld [vmem:[%s0 + $0x260] sm:$0xff]
  %v73 = vld [vmem:[%s0 + $0x268] sm:$0xff]
  %v74 = vld [vmem:[%s0 + $0x270] sm:$0xff]
  %v75 = vld [vmem:[%s0 + $0x280] sm:$0xff]
  %v76 = vld [vmem:[%s0 + $0x288] sm:$0xff]
  %v77 = vld [vmem:[%s0 + $0x290] sm:$0xff]
  %v78 = vld [vmem:[%s0 + $0x2a0] sm:$0xff]
  %v79 = vld [vmem:[%s0 + $0x2a8] sm:$0xff]
  %v80 = vld [vmem:[%s0 + $0x2b0] sm:$0xff]
  %v81 = vld [vmem:[%s0 + $0x2c0] sm:$0xff]
  %v82 = vld [vmem:[%s0 + $0x2c8] sm:$0xff]
  %v83 = vld [vmem:[%s0 + $0x2d0] sm:$0xff]
  %v84 = vld [vmem:[%s0 + $0x2e0] sm:$0xff]
  %v85 = vld [vmem:[%s0 + $0x2e8] sm:$0xff]
  %v86 = vld [vmem:[%s0 + $0x2f0] sm:$0xff]
  %v87 = vld [vmem:[%s0 + $0x300] sm:$0xff]
  %v88 = vld [vmem:[%s0 + $0x308] sm:$0xff]
  %v89 = vld [vmem:[%s0 + $0x310] sm:$0xff]
  %v90 = vld [vmem:[%s0 + $0x320] sm:$0xff]
  %v91 = vld [vmem:[%s0 + $0x328] sm:$0xff]
  %v92 = vld [vmem:[%s0 + $0x330] sm:$0xff]
  %v93 = vpack.c.bf16 %v16, %v15
  %v94 = vpack.c.bf16 %v18, %v17
  %v95 = vpack.c.bf16 %v20, %v19
  %v96 = vpack.c.bf16 %v22, %v21
  %v97 = vpack.c.bf16 %v24, %v23
  %v98 = vpack.c.bf16 %v26, %v25
  %v99 = vpack.c.bf16 %v28, %v27
  %v100 = vpack.c.bf16 %v30, %v29
  %v101 = vpack.c.bf16 %v32, %v31
  %v102 = vpack.c.bf16 %v34, %v33
  %v103 = vpack.c.bf16 %v36, %v35
  %v104 = vpack.c.bf16 %v38, %v37
  %v105 = vpack.c.bf16 %v40, %v39
  %v106 = vpack.c.bf16 %v42, %v41
  %v107 = vpack.c.bf16 %v44, %v43
  %v108 = vpack.c.bf16 %v46, %v45
  %v109 = vpack.c.bf16 %v48, %v47
  %v110 = vpack.c.bf16 %v50, %v49
  %v111 = vpack.c.bf16 %v52, %v51
  %v112 = vpack.c.bf16 %v54, %v53
  %v113 = vpack.c.bf16 %v56, %v55
  %v114 = vpack.c.bf16 %v58, %v57
  %v115 = vpack.c.bf16 %v60, %v59
  %v116 = vpack.c.bf16 %v62, %v61
  %v117 = vpack.c.bf16 %v64, %v63
  %v118 = vpack.c.bf16 %v66, %v65
  %v119 = vpack.c.bf16 %v68, %v67
  %v120 = vpack.c.bf16 %v70, %v69
  %v121 = vpack.c.bf16 %v72, %v71
  %v122 = vpack.c.bf16 %v74, %v73
  %v123 = vpack.c.bf16 %v76, %v75
  %v124 = vpack.c.bf16 %v78, %v77
  %v125 = vpack.c.bf16 %v80, %v79
  %v126 = vpack.c.bf16 %v82, %v81
  %v127 = vpack.c.bf16 %v84, %v83
  %v128 = vpack.c.bf16 %v86, %v85
  %v129 = vld [vmem:[%s1] sm:$0xf]
  %v130 = vld [vmem:[%s1 + $0x4] sm:$0xf]
  %v131 = vld [vmem:[%s1 + $0x8] sm:$0xf]
  %v132 = vld [vmem:[%s1 + $0xc] sm:$0xf]
  %v133 = vpack.c.bf16 %v19, %v18
  %v134 = vpack.c.bf16 %v21, %v20
  %v135 = vpack.c.bf16 %v23, %v22
  %v136 = vpack.c.bf16 %v25, %v24
  %v137 = vpack.c.bf16 %v27, %v26
  %v138 = vpack.c.bf16 %v29, %v28
  %v139 = vpack.c.bf16 %v31, %v30
  %v140 = vpack.c.bf16 %v33, %v32
  %v141 = vpack.c.bf16 %v35, %v34
  %v142 = vpack.c.bf16 %v37, %v36
  %v143 = vpack.c.bf16 %v39, %v38
  %v144 = vpack.c.bf16 %v41, %v40
  %v145 = vpack.c.bf16 %v43, %v42
  %v146 = vpack.c.bf16 %v45, %v44
  %v147 = vpack.c.bf16 %v47, %v46
  %v148 = vpack.c.bf16 %v49, %v48
  %v149 = vpack.c.bf16 %v51, %v50
  %v150 = vpack.c.bf16 %v53, %v52
  %v151 = vpack.c.bf16 %v55, %v54
  %v152 = vpack.c.bf16 %v57, %v56
  %v153 = vpack.c.bf16 %v59, %v58
  %v154 = vpack.c.bf16 %v61, %v60
  %v155 = vpack.c.bf16 %v63, %v62
  %v156 = vpack.c.bf16 %v65, %v64
  %v157 = vpack.c.bf16 %v67, %v66
  %v158 = vpack.c.bf16 %v69, %v68
  %v159 = vpack.c.bf16 %v71, %v70
  %v160 = vpack.c.bf16 %v73, %v72
  %v161 = vpack.c.bf16 %v75, %v74
  %v162 = vpack.c.bf16 %v77, %v76
  %v163 = vpack.c.bf16 %v79, %v78
  %v164 = vpack.c.bf16 %v81, %v80
  %v165 = vpack.c.bf16 %v83, %v82
  %v166 = vpack.c.bf16 %v85, %v84
  %v167 = vpack.c.bf16 %v87, %v86
  %v168 = vpack.c.bf16 %v89, %v88
  %s169 = scalar_lea.vmem %s1, 48
  %v170 = vld [vmem:[%s169] sm:$0xf]
  %v171 = vld [vmem:[%s169 + $0x4] sm:$0xf]
  %v172 = vld [vmem:[%s169 + $0x8] sm:$0xf]
  %v173 = vld [vmem:[%s169 + $0xc] sm:$0xf]
  %v178 = vunpack.c.l.b16 %v170
  %v179 = vunpack.c.l.b16 %v171
  %v180 = vunpack.c.l.b16 %v172
  %v181 = vunpack.c.l.b16 %v173
  %v182 = vpack.c.b16 %v179, %v178
  %v183 = vpack.c.b16 %v181, %v180
  %vm186 = vcmask 261120
  %v188 = vsel %vm186, %v133, 0
  %v191 = vsel %vm186, %v134, 0
  %v194 = vsel %vm186, %v135, 0
  %v197 = vsel %vm186, %v136, 0
  %v200 = vsel %vm186, %v137, 0
  %v203 = vsel %vm186, %v138, 0
  %v206 = vsel %vm186, %v139, 0
  %v209 = vsel %vm186, %v140, 0
  %v212 = vsel %vm186, %v141, 0
  %v215 = vsel %vm186, %v142, 0
  %v218 = vsel %vm186, %v143, 0
  %v221 = vsel %vm186, %v144, 0
  %v224 = vsel %vm186, %v145, 0
  %v227 = vsel %vm186, %v146, 0
  %v230 = vsel %vm186, %v147, 0
  %v233 = vsel %vm186, %v148, 0
  %v236 = vsel %vm186, %v149, 0
  %v239 = vsel %vm186, %v150, 0
  %v242 = vsel %vm186, %v151, 0
  %v245 = vsel %vm186, %v152, 0
  %v248 = vsel %vm186, %v153, 0
  %v251 = vsel %vm186, %v154, 0
  %v254 = vsel %vm186, %v155, 0
  %v257 = vsel %vm186, %v156, 0
  %v260 = vsel %vm186, %v157, 0
  %v263 = vsel %vm186, %v158, 0
  %v266 = vsel %vm186, %v159, 0
  %v269 = vsel %vm186, %v160, 0
  %v272 = vsel %vm186, %v161, 0
  %v275 = vsel %vm186, %v162, 0
  %v278 = vsel %vm186, %v163, 0
  %v281 = vsel %vm186, %v164, 0
  %v284 = vsel %vm186, %v165, 0
  %v287 = vsel %vm186, %v166, 0
  %v290 = vsel %vm186, %v167, 0
  %v293 = vsel %vm186, %v168, 0
  %295 = vmatpush.bf16.msra.mxu0 0
  %296 = vmatpush.bf16.msra.mxu0 0
  %297 = vmatpush.bf16.msra.mxu0 0
  %298 = vmatpush.bf16.msra.mxu0 0
  %299 = vmatpush.bf16.msra.mxu0 0
  %300 = vmatpush.bf16.msra.mxu0 0
  %301 = vmatpush.bf16.msra.mxu0 %v183
  %302 = vmatpush.bf16.msra.mxu0 %v182
  %303 = vmatmul.bf16.gmra.mxu0 %v188
  %v304 = vpop.f32.mrf.mxu0
  %v305 = vadd.f32 0.0, %v304
  %v306 = vpop.f32.mrf.mxu0
  %v307 = vadd.f32 0.0, %v306
  %308 = vmatmul.bf16.gmra.mxu0 %v191
  %v309 = vpop.f32.mrf.mxu0
  %v310 = vadd.f32 0.0, %v309
  %v311 = vpop.f32.mrf.mxu0
  %v312 = vadd.f32 0.0, %v311
  %313 = vmatmul.bf16.gmra.mxu0 %v194
  %v314 = vpop.f32.mrf.mxu0
  %v315 = vadd.f32 0.0, %v314
  %v316 = vpop.f32.mrf.mxu0
  %v317 = vadd.f32 0.0, %v316
  %318 = vmatmul.bf16.gmra.mxu0 %v197
  %v319 = vpop.f32.mrf.mxu0
  %v320 = vadd.f32 0.0, %v319
  %v321 = vpop.f32.mrf.mxu0
  %v322 = vadd.f32 0.0, %v321
  %323 = vmatmul.bf16.gmra.mxu0 %v200
  %v324 = vpop.f32.mrf.mxu0
  %v325 = vadd.f32 0.0, %v324
  %v326 = vpop.f32.mrf.mxu0
  %v327 = vadd.f32 0.0, %v326
  %328 = vmatmul.bf16.gmra.mxu0 %v203
  %v329 = vpop.f32.mrf.mxu0
  %v330 = vadd.f32 0.0, %v329
  %v331 = vpop.f32.mrf.mxu0
  %v332 = vadd.f32 0.0, %v331
  %333 = vmatmul.bf16.gmra.mxu0 %v206
  %v334 = vpop.f32.mrf.mxu0
  %v335 = vadd.f32 0.0, %v334
  %v336 = vpop.f32.mrf.mxu0
  %v337 = vadd.f32 0.0, %v336
  %338 = vmatmul.bf16.gmra.mxu0 %v209
  %v339 = vpop.f32.mrf.mxu0
  %v340 = vadd.f32 0.0, %v339
  %v341 = vpop.f32.mrf.mxu0
  %v342 = vadd.f32 0.0, %v341
  %343 = vmatmul.bf16.gmra.mxu0 %v212
  %v344 = vpop.f32.mrf.mxu0
  %v345 = vadd.f32 0.0, %v344
  %v346 = vpop.f32.mrf.mxu0
  %v347 = vadd.f32 0.0, %v346
  %348 = vmatmul.bf16.gmra.mxu0 %v215
  %v349 = vpop.f32.mrf.mxu0
  %v350 = vadd.f32 0.0, %v349
  %v351 = vpop.f32.mrf.mxu0
  %v352 = vadd.f32 0.0, %v351
  %353 = vmatmul.bf16.gmra.mxu0 %v218
  %v354 = vpop.f32.mrf.mxu0
  %v355 = vadd.f32 0.0, %v354
  %v356 = vpop.f32.mrf.mxu0
  %v357 = vadd.f32 0.0, %v356
  %358 = vmatmul.bf16.gmra.mxu0 %v221
  %v359 = vpop.f32.mrf.mxu0
  %v360 = vadd.f32 0.0, %v359
  %v361 = vpop.f32.mrf.mxu0
  %v362 = vadd.f32 0.0, %v361
  %363 = vmatmul.bf16.gmra.mxu0 %v224
  %v364 = vpop.f32.mrf.mxu0
  %v365 = vadd.f32 0.0, %v364
  %v366 = vpop.f32.mrf.mxu0
  %v367 = vadd.f32 0.0, %v366
  %368 = vmatmul.bf16.gmra.mxu0 %v227
  %v369 = vpop.f32.mrf.mxu0
  %v370 = vadd.f32 0.0, %v369
  %v371 = vpop.f32.mrf.mxu0
  %v372 = vadd.f32 0.0, %v371
  %373 = vmatmul.bf16.gmra.mxu0 %v230
  %v374 = vpop.f32.mrf.mxu0
  %v375 = vadd.f32 0.0, %v374
  %v376 = vpop.f32.mrf.mxu0
  %v377 = vadd.f32 0.0, %v376
  %378 = vmatmul.bf16.gmra.mxu0 %v233
  %v379 = vpop.f32.mrf.mxu0
  %v380 = vadd.f32 0.0, %v379
  %v381 = vpop.f32.mrf.mxu0
  %v382 = vadd.f32 0.0, %v381
  %383 = vmatmul.bf16.gmra.mxu0 %v236
  %v384 = vpop.f32.mrf.mxu0
  %v385 = vadd.f32 0.0, %v384
  %v386 = vpop.f32.mrf.mxu0
  %v387 = vadd.f32 0.0, %v386
  %388 = vmatmul.bf16.gmra.mxu0 %v239
  %v389 = vpop.f32.mrf.mxu0
  %v390 = vadd.f32 0.0, %v389
  %v391 = vpop.f32.mrf.mxu0
  %v392 = vadd.f32 0.0, %v391
  %393 = vmatmul.bf16.gmra.mxu0 %v242
  %v394 = vpop.f32.mrf.mxu0
  %v395 = vadd.f32 0.0, %v394
  %v396 = vpop.f32.mrf.mxu0
  %v397 = vadd.f32 0.0, %v396
  %398 = vmatmul.bf16.gmra.mxu0 %v245
  %v399 = vpop.f32.mrf.mxu0
  %v400 = vadd.f32 0.0, %v399
  %v401 = vpop.f32.mrf.mxu0
  %v402 = vadd.f32 0.0, %v401
  %403 = vmatmul.bf16.gmra.mxu0 %v248
  %v404 = vpop.f32.mrf.mxu0
  %v405 = vadd.f32 0.0, %v404
  %v406 = vpop.f32.mrf.mxu0
  %v407 = vadd.f32 0.0, %v406
  %408 = vmatmul.bf16.gmra.mxu0 %v251
  %v409 = vpop.f32.mrf.mxu0
  %v410 = vadd.f32 0.0, %v409
  %v411 = vpop.f32.mrf.mxu0
  %v412 = vadd.f32 0.0, %v411
  %413 = vmatmul.bf16.gmra.mxu0 %v254
  %v414 = vpop.f32.mrf.mxu0
  %v415 = vadd.f32 0.0, %v414
  %v416 = vpop.f32.mrf.mxu0
  %v417 = vadd.f32 0.0, %v416
  %418 = vmatmul.bf16.gmra.mxu0 %v257
  %v419 = vpop.f32.mrf.mxu0
  %v420 = vadd.f32 0.0, %v419
  %v421 = vpop.f32.mrf.mxu0
  %v422 = vadd.f32 0.0, %v421
  %423 = vmatmul.bf16.gmra.mxu0 %v260
  %v424 = vpop.f32.mrf.mxu0
  %v425 = vadd.f32 0.0, %v424
  %v426 = vpop.f32.mrf.mxu0
  %v427 = vadd.f32 0.0, %v426
  %428 = vmatmul.bf16.gmra.mxu0 %v263
  %v429 = vpop.f32.mrf.mxu0
  %v430 = vadd.f32 0.0, %v429
  %v431 = vpop.f32.mrf.mxu0
  %v432 = vadd.f32 0.0, %v431
  %433 = vmatmul.bf16.gmra.mxu0 %v266
  %v434 = vpop.f32.mrf.mxu0
  %v435 = vadd.f32 0.0, %v434
  %v436 = vpop.f32.mrf.mxu0
  %v437 = vadd.f32 0.0, %v436
  %438 = vmatmul.bf16.gmra.mxu0 %v269
  %v439 = vpop.f32.mrf.mxu0
  %v440 = vadd.f32 0.0, %v439
  %v441 = vpop.f32.mrf.mxu0
  %v442 = vadd.f32 0.0, %v441
  %443 = vmatmul.bf16.gmra.mxu0 %v272
  %v444 = vpop.f32.mrf.mxu0
  %v445 = vadd.f32 0.0, %v444
  %v446 = vpop.f32.mrf.mxu0
  %v447 = vadd.f32 0.0, %v446
  %448 = vmatmul.bf16.gmra.mxu0 %v275
  %v449 = vpop.f32.mrf.mxu0
  %v450 = vadd.f32 0.0, %v449
  %v451 = vpop.f32.mrf.mxu0
  %v452 = vadd.f32 0.0, %v451
  %453 = vmatmul.bf16.gmra.mxu0 %v278
  %v454 = vpop.f32.mrf.mxu0
  %v455 = vadd.f32 0.0, %v454
  %v456 = vpop.f32.mrf.mxu0
  %v457 = vadd.f32 0.0, %v456
  %458 = vmatmul.bf16.gmra.mxu0 %v281
  %v459 = vpop.f32.mrf.mxu0
  %v460 = vadd.f32 0.0, %v459
  %v461 = vpop.f32.mrf.mxu0
  %v462 = vadd.f32 0.0, %v461
  %463 = vmatmul.bf16.gmra.mxu0 %v284
  %v464 = vpop.f32.mrf.mxu0
  %v465 = vadd.f32 0.0, %v464
  %v466 = vpop.f32.mrf.mxu0
  %v467 = vadd.f32 0.0, %v466
  %468 = vmatmul.bf16.gmra.mxu0 %v287
  %v469 = vpop.f32.mrf.mxu0
  %v470 = vadd.f32 0.0, %v469
  %v471 = vpop.f32.mrf.mxu0
  %v472 = vadd.f32 0.0, %v471
  %473 = vmatmul.bf16.gmra.mxu0 %v290
  %v474 = vpop.f32.mrf.mxu0
  %v475 = vadd.f32 0.0, %v474
  %v476 = vpop.f32.mrf.mxu0
  %v477 = vadd.f32 0.0, %v476
  %478 = vmatmul.bf16.gmra.mxu0 %v293
  %v479 = vpop.f32.mrf.mxu0
  %v480 = vadd.f32 0.0, %v479
  %v481 = vpop.f32.mrf.mxu0
  %v482 = vadd.f32 0.0, %v481
  %483 = vdwg.mxu0
  %v488 = vunpack.c.l.b16 %v129
  %v489 = vunpack.c.l.b16 %v130
  %v490 = vunpack.c.l.b16 %v131
  %v491 = vunpack.c.l.b16 %v132
  %v492 = vpack.c.b16 %v489, %v488
  %v493 = vpack.c.b16 %v491, %v490
  %v497 = vsel %vm186, %v93, 0
  %v500 = vsel %vm186, %v94, 0
  %v503 = vsel %vm186, %v95, 0
  %v506 = vsel %vm186, %v96, 0
  %v509 = vsel %vm186, %v97, 0
  %v512 = vsel %vm186, %v98, 0
  %v515 = vsel %vm186, %v99, 0
  %v518 = vsel %vm186, %v100, 0
  %v521 = vsel %vm186, %v101, 0
  %v524 = vsel %vm186, %v102, 0
  %v527 = vsel %vm186, %v103, 0
  %v530 = vsel %vm186, %v104, 0
  %v533 = vsel %vm186, %v105, 0
  %v536 = vsel %vm186, %v106, 0
  %v539 = vsel %vm186, %v107, 0
  %v542 = vsel %vm186, %v108, 0
  %v545 = vsel %vm186, %v109, 0
  %v548 = vsel %vm186, %v110, 0
  %v551 = vsel %vm186, %v111, 0
  %v554 = vsel %vm186, %v112, 0
  %v557 = vsel %vm186, %v113, 0
  %v560 = vsel %vm186, %v114, 0
  %v563 = vsel %vm186, %v115, 0
  %v566 = vsel %vm186, %v116, 0
  %v569 = vsel %vm186, %v117, 0
  %v572 = vsel %vm186, %v118, 0
  %v575 = vsel %vm186, %v119, 0
  %v578 = vsel %vm186, %v120, 0
  %v581 = vsel %vm186, %v121, 0
  %v584 = vsel %vm186, %v122, 0
  %v587 = vsel %vm186, %v123, 0
  %v590 = vsel %vm186, %v124, 0
  %v593 = vsel %vm186, %v125, 0
  %v596 = vsel %vm186, %v126, 0
  %v599 = vsel %vm186, %v127, 0
  %v602 = vsel %vm186, %v128, 0
  %604 = vmatpush.bf16.msra.mxu0 0
  %605 = vmatpush.bf16.msra.mxu0 0
  %606 = vmatpush.bf16.msra.mxu0 0
  %607 = vmatpush.bf16.msra.mxu0 0
  %608 = vmatpush.bf16.msra.mxu0 0
  %609 = vmatpush.bf16.msra.mxu0 0
  %610 = vmatpush.bf16.msra.mxu0 %v493
  %611 = vmatpush.bf16.msra.mxu0 %v492
  %612 = vmatmul.bf16.gmra.mxu0 %v497
  %v613 = vpop.f32.mrf.mxu0
  %v614 = vadd.f32 %v305, %v613
  %v615 = vpop.f32.mrf.mxu0
  %v616 = vadd.f32 %v307, %v615
  %617 = vmatmul.bf16.gmra.mxu0 %v500
  %v618 = vpop.f32.mrf.mxu0
  %v619 = vadd.f32 %v310, %v618
  %v620 = vpop.f32.mrf.mxu0
  %v621 = vadd.f32 %v312, %v620
  %622 = vmatmul.bf16.gmra.mxu0 %v503
  %v623 = vpop.f32.mrf.mxu0
  %v624 = vadd.f32 %v315, %v623
  %v625 = vpop.f32.mrf.mxu0
  %v626 = vadd.f32 %v317, %v625
  %627 = vmatmul.bf16.gmra.mxu0 %v506
  %v628 = vpop.f32.mrf.mxu0
  %v629 = vadd.f32 %v320, %v628
  %v630 = vpop.f32.mrf.mxu0
  %v631 = vadd.f32 %v322, %v630
  %632 = vmatmul.bf16.gmra.mxu0 %v509
  %v633 = vpop.f32.mrf.mxu0
  %v634 = vadd.f32 %v325, %v633
  %v635 = vpop.f32.mrf.mxu0
  %v636 = vadd.f32 %v327, %v635
  %637 = vmatmul.bf16.gmra.mxu0 %v512
  %v638 = vpop.f32.mrf.mxu0
  %v639 = vadd.f32 %v330, %v638
  %v640 = vpop.f32.mrf.mxu0
  %v641 = vadd.f32 %v332, %v640
  %642 = vmatmul.bf16.gmra.mxu0 %v515
  %v643 = vpop.f32.mrf.mxu0
  %v644 = vadd.f32 %v335, %v643
  %v645 = vpop.f32.mrf.mxu0
  %v646 = vadd.f32 %v337, %v645
  %647 = vmatmul.bf16.gmra.mxu0 %v518
  %v648 = vpop.f32.mrf.mxu0
  %v649 = vadd.f32 %v340, %v648
  %v650 = vpop.f32.mrf.mxu0
  %v651 = vadd.f32 %v342, %v650
  %652 = vmatmul.bf16.gmra.mxu0 %v521
  %v653 = vpop.f32.mrf.mxu0
  %v654 = vadd.f32 %v345, %v653
  %v655 = vpop.f32.mrf.mxu0
  %v656 = vadd.f32 %v347, %v655
  %657 = vmatmul.bf16.gmra.mxu0 %v524
  %v658 = vpop.f32.mrf.mxu0
  %v659 = vadd.f32 %v350, %v658
  %v660 = vpop.f32.mrf.mxu0
  %v661 = vadd.f32 %v352, %v660
  %662 = vmatmul.bf16.gmra.mxu0 %v527
  %v663 = vpop.f32.mrf.mxu0
  %v664 = vadd.f32 %v355, %v663
  %v665 = vpop.f32.mrf.mxu0
  %v666 = vadd.f32 %v357, %v665
  %667 = vmatmul.bf16.gmra.mxu0 %v530
  %v668 = vpop.f32.mrf.mxu0
  %v669 = vadd.f32 %v360, %v668
  %v670 = vpop.f32.mrf.mxu0
  %v671 = vadd.f32 %v362, %v670
  %672 = vmatmul.bf16.gmra.mxu0 %v533
  %v673 = vpop.f32.mrf.mxu0
  %v674 = vadd.f32 %v365, %v673
  %v675 = vpop.f32.mrf.mxu0
  %v676 = vadd.f32 %v367, %v675
  %677 = vmatmul.bf16.gmra.mxu0 %v536
  %v678 = vpop.f32.mrf.mxu0
  %v679 = vadd.f32 %v370, %v678
  %v680 = vpop.f32.mrf.mxu0
  %v681 = vadd.f32 %v372, %v680
  %682 = vmatmul.bf16.gmra.mxu0 %v539
  %v683 = vpop.f32.mrf.mxu0
  %v684 = vadd.f32 %v375, %v683
  %v685 = vpop.f32.mrf.mxu0
  %v686 = vadd.f32 %v377, %v685
  %687 = vmatmul.bf16.gmra.mxu0 %v542
  %v688 = vpop.f32.mrf.mxu0
  %v689 = vadd.f32 %v380, %v688
  %v690 = vpop.f32.mrf.mxu0
  %v691 = vadd.f32 %v382, %v690
  %692 = vmatmul.bf16.gmra.mxu0 %v545
  %v693 = vpop.f32.mrf.mxu0
  %v694 = vadd.f32 %v385, %v693
  %v695 = vpop.f32.mrf.mxu0
  %v696 = vadd.f32 %v387, %v695
  %697 = vmatmul.bf16.gmra.mxu0 %v548
  %v698 = vpop.f32.mrf.mxu0
  %v699 = vadd.f32 %v390, %v698
  %v700 = vpop.f32.mrf.mxu0
  %v701 = vadd.f32 %v392, %v700
  %702 = vmatmul.bf16.gmra.mxu0 %v551
  %v703 = vpop.f32.mrf.mxu0
  %v704 = vadd.f32 %v395, %v703
  %v705 = vpop.f32.mrf.mxu0
  %v706 = vadd.f32 %v397, %v705
  %707 = vmatmul.bf16.gmra.mxu0 %v554
  %v708 = vpop.f32.mrf.mxu0
  %v709 = vadd.f32 %v400, %v708
  %v710 = vpop.f32.mrf.mxu0
  %v711 = vadd.f32 %v402, %v710
  %712 = vmatmul.bf16.gmra.mxu0 %v557
  %v713 = vpop.f32.mrf.mxu0
  %v714 = vadd.f32 %v405, %v713
  %v715 = vpop.f32.mrf.mxu0
  %v716 = vadd.f32 %v407, %v715
  %717 = vmatmul.bf16.gmra.mxu0 %v560
  %v718 = vpop.f32.mrf.mxu0
  %v719 = vadd.f32 %v410, %v718
  %v720 = vpop.f32.mrf.mxu0
  %v721 = vadd.f32 %v412, %v720
  %722 = vmatmul.bf16.gmra.mxu0 %v563
  %v723 = vpop.f32.mrf.mxu0
  %v724 = vadd.f32 %v415, %v723
  %v725 = vpop.f32.mrf.mxu0
  %v726 = vadd.f32 %v417, %v725
  %727 = vmatmul.bf16.gmra.mxu0 %v566
  %v728 = vpop.f32.mrf.mxu0
  %v729 = vadd.f32 %v420, %v728
  %v730 = vpop.f32.mrf.mxu0
  %v731 = vadd.f32 %v422, %v730
  %732 = vmatmul.bf16.gmra.mxu0 %v569
  %v733 = vpop.f32.mrf.mxu0
  %v734 = vadd.f32 %v425, %v733
  %v735 = vpop.f32.mrf.mxu0
  %v736 = vadd.f32 %v427, %v735
  %737 = vmatmul.bf16.gmra.mxu0 %v572
  %v738 = vpop.f32.mrf.mxu0
  %v739 = vadd.f32 %v430, %v738
  %v740 = vpop.f32.mrf.mxu0
  %v741 = vadd.f32 %v432, %v740
  %742 = vmatmul.bf16.gmra.mxu0 %v575
  %v743 = vpop.f32.mrf.mxu0
  %v744 = vadd.f32 %v435, %v743
  %v745 = vpop.f32.mrf.mxu0
  %v746 = vadd.f32 %v437, %v745
  %747 = vmatmul.bf16.gmra.mxu0 %v578
  %v748 = vpop.f32.mrf.mxu0
  %v749 = vadd.f32 %v440, %v748
  %v750 = vpop.f32.mrf.mxu0
  %v751 = vadd.f32 %v442, %v750
  %752 = vmatmul.bf16.gmra.mxu0 %v581
  %v753 = vpop.f32.mrf.mxu0
  %v754 = vadd.f32 %v445, %v753
  %v755 = vpop.f32.mrf.mxu0
  %v756 = vadd.f32 %v447, %v755
  %757 = vmatmul.bf16.gmra.mxu0 %v584
  %v758 = vpop.f32.mrf.mxu0
  %v759 = vadd.f32 %v450, %v758
  %v760 = vpop.f32.mrf.mxu0
  %v761 = vadd.f32 %v452, %v760
  %762 = vmatmul.bf16.gmra.mxu0 %v587
  %v763 = vpop.f32.mrf.mxu0
  %v764 = vadd.f32 %v455, %v763
  %v765 = vpop.f32.mrf.mxu0
  %v766 = vadd.f32 %v457, %v765
  %767 = vmatmul.bf16.gmra.mxu0 %v590
  %v768 = vpop.f32.mrf.mxu0
  %v769 = vadd.f32 %v460, %v768
  %v770 = vpop.f32.mrf.mxu0
  %v771 = vadd.f32 %v462, %v770
  %772 = vmatmul.bf16.gmra.mxu0 %v593
  %v773 = vpop.f32.mrf.mxu0
  %v774 = vadd.f32 %v465, %v773
  %v775 = vpop.f32.mrf.mxu0
  %v776 = vadd.f32 %v467, %v775
  %777 = vmatmul.bf16.gmra.mxu0 %v596
  %v778 = vpop.f32.mrf.mxu0
  %v779 = vadd.f32 %v470, %v778
  %v780 = vpop.f32.mrf.mxu0
  %v781 = vadd.f32 %v472, %v780
  %782 = vmatmul.bf16.gmra.mxu0 %v599
  %v783 = vpop.f32.mrf.mxu0
  %v784 = vadd.f32 %v475, %v783
  %v785 = vpop.f32.mrf.mxu0
  %v786 = vadd.f32 %v477, %v785
  %787 = vmatmul.bf16.gmra.mxu0 %v602
  %v788 = vpop.f32.mrf.mxu0
  %v789 = vadd.f32 %v480, %v788
  %v790 = vpop.f32.mrf.mxu0
  %v791 = vadd.f32 %v482, %v790
  %792 = vdwg.mxu0
  %v793 = vpack.c.bf16 %v88, %v87
  %v794 = vpack.c.bf16 %v90, %v89
  %v795 = vpack.c.bf16 %v92, %v91
  %s796 = scalar_lea.vmem %s1, 96
  %v797 = vld [vmem:[%s796] sm:$0xf]
  %v798 = vld [vmem:[%s796 + $0x4] sm:$0xf]
  %v799 = vld [vmem:[%s796 + $0x8] sm:$0xf]
  %v800 = vld [vmem:[%s796 + $0xc] sm:$0xf]
  %v805 = vunpack.c.l.b16 %v797
  %v806 = vunpack.c.l.b16 %v798
  %v807 = vunpack.c.l.b16 %v799
  %v808 = vunpack.c.l.b16 %v800
  %v809 = vpack.c.b16 %v806, %v805
  %v810 = vpack.c.b16 %v808, %v807
  %v814 = vsel %vm186, %v793, 0
  %v817 = vsel %vm186, %v794, 0
  %v820 = vsel %vm186, %v795, 0
  %822 = vmatpush.bf16.msra.mxu0 0
  %823 = vmatpush.bf16.msra.mxu0 0
  %824 = vmatpush.bf16.msra.mxu0 0
  %825 = vmatpush.bf16.msra.mxu0 0
  %826 = vmatpush.bf16.msra.mxu0 0
  %827 = vmatpush.bf16.msra.mxu0 0
  %828 = vmatpush.bf16.msra.mxu0 %v810
  %829 = vmatpush.bf16.msra.mxu0 %v809
  %830 = vmatmul.bf16.gmra.mxu0 %v506
  %v831 = vpop.f32.mrf.mxu0
  %v832 = vadd.f32 0.0, %v831
  %v833 = vpop.f32.mrf.mxu0
  %v834 = vadd.f32 0.0, %v833
  %835 = vmatmul.bf16.gmra.mxu0 %v509
  %v836 = vpop.f32.mrf.mxu0
  %v837 = vadd.f32 0.0, %v836
  %v838 = vpop.f32.mrf.mxu0
  %v839 = vadd.f32 0.0, %v838
  %840 = vmatmul.bf16.gmra.mxu0 %v512
  %v841 = vpop.f32.mrf.mxu0
  %v842 = vadd.f32 0.0, %v841
  %v843 = vpop.f32.mrf.mxu0
  %v844 = vadd.f32 0.0, %v843
  %845 = vmatmul.bf16.gmra.mxu0 %v515
  %v846 = vpop.f32.mrf.mxu0
  %v847 = vadd.f32 0.0, %v846
  %v848 = vpop.f32.mrf.mxu0
  %v849 = vadd.f32 0.0, %v848
  %850 = vmatmul.bf16.gmra.mxu0 %v518
  %v851 = vpop.f32.mrf.mxu0
  %v852 = vadd.f32 0.0, %v851
  %v853 = vpop.f32.mrf.mxu0
  %v854 = vadd.f32 0.0, %v853
  %855 = vmatmul.bf16.gmra.mxu0 %v521
  %v856 = vpop.f32.mrf.mxu0
  %v857 = vadd.f32 0.0, %v856
  %v858 = vpop.f32.mrf.mxu0
  %v859 = vadd.f32 0.0, %v858
  %860 = vmatmul.bf16.gmra.mxu0 %v524
  %v861 = vpop.f32.mrf.mxu0
  %v862 = vadd.f32 0.0, %v861
  %v863 = vpop.f32.mrf.mxu0
  %v864 = vadd.f32 0.0, %v863
  %865 = vmatmul.bf16.gmra.mxu0 %v527
  %v866 = vpop.f32.mrf.mxu0
  %v867 = vadd.f32 0.0, %v866
  %v868 = vpop.f32.mrf.mxu0
  %v869 = vadd.f32 0.0, %v868
  %870 = vmatmul.bf16.gmra.mxu0 %v530
  %v871 = vpop.f32.mrf.mxu0
  %v872 = vadd.f32 0.0, %v871
  %v873 = vpop.f32.mrf.mxu0
  %v874 = vadd.f32 0.0, %v873
  %875 = vmatmul.bf16.gmra.mxu0 %v533
  %v876 = vpop.f32.mrf.mxu0
  %v877 = vadd.f32 0.0, %v876
  %v878 = vpop.f32.mrf.mxu0
  %v879 = vadd.f32 0.0, %v878
  %880 = vmatmul.bf16.gmra.mxu0 %v536
  %v881 = vpop.f32.mrf.mxu0
  %v882 = vadd.f32 0.0, %v881
  %v883 = vpop.f32.mrf.mxu0
  %v884 = vadd.f32 0.0, %v883
  %885 = vmatmul.bf16.gmra.mxu0 %v539
  %v886 = vpop.f32.mrf.mxu0
  %v887 = vadd.f32 0.0, %v886
  %v888 = vpop.f32.mrf.mxu0
  %v889 = vadd.f32 0.0, %v888
  %890 = vmatmul.bf16.gmra.mxu0 %v542
  %v891 = vpop.f32.mrf.mxu0
  %v892 = vadd.f32 0.0, %v891
  %v893 = vpop.f32.mrf.mxu0
  %v894 = vadd.f32 0.0, %v893
  %895 = vmatmul.bf16.gmra.mxu0 %v545
  %v896 = vpop.f32.mrf.mxu0
  %v897 = vadd.f32 0.0, %v896
  %v898 = vpop.f32.mrf.mxu0
  %v899 = vadd.f32 0.0, %v898
  %900 = vmatmul.bf16.gmra.mxu0 %v548
  %v901 = vpop.f32.mrf.mxu0
  %v902 = vadd.f32 0.0, %v901
  %v903 = vpop.f32.mrf.mxu0
  %v904 = vadd.f32 0.0, %v903
  %905 = vmatmul.bf16.gmra.mxu0 %v551
  %v906 = vpop.f32.mrf.mxu0
  %v907 = vadd.f32 0.0, %v906
  %v908 = vpop.f32.mrf.mxu0
  %v909 = vadd.f32 0.0, %v908
  %910 = vmatmul.bf16.gmra.mxu0 %v554
  %v911 = vpop.f32.mrf.mxu0
  %v912 = vadd.f32 0.0, %v911
  %v913 = vpop.f32.mrf.mxu0
  %v914 = vadd.f32 0.0, %v913
  %915 = vmatmul.bf16.gmra.mxu0 %v557
  %v916 = vpop.f32.mrf.mxu0
  %v917 = vadd.f32 0.0, %v916
  %v918 = vpop.f32.mrf.mxu0
  %v919 = vadd.f32 0.0, %v918
  %920 = vmatmul.bf16.gmra.mxu0 %v560
  %v921 = vpop.f32.mrf.mxu0
  %v922 = vadd.f32 0.0, %v921
  %v923 = vpop.f32.mrf.mxu0
  %v924 = vadd.f32 0.0, %v923
  %925 = vmatmul.bf16.gmra.mxu0 %v563
  %v926 = vpop.f32.mrf.mxu0
  %v927 = vadd.f32 0.0, %v926
  %v928 = vpop.f32.mrf.mxu0
  %v929 = vadd.f32 0.0, %v928
  %930 = vmatmul.bf16.gmra.mxu0 %v566
  %v931 = vpop.f32.mrf.mxu0
  %v932 = vadd.f32 0.0, %v931
  %v933 = vpop.f32.mrf.mxu0
  %v934 = vadd.f32 0.0, %v933
  %935 = vmatmul.bf16.gmra.mxu0 %v569
  %v936 = vpop.f32.mrf.mxu0
  %v937 = vadd.f32 0.0, %v936
  %v938 = vpop.f32.mrf.mxu0
  %v939 = vadd.f32 0.0, %v938
  %940 = vmatmul.bf16.gmra.mxu0 %v572
  %v941 = vpop.f32.mrf.mxu0
  %v942 = vadd.f32 0.0, %v941
  %v943 = vpop.f32.mrf.mxu0
  %v944 = vadd.f32 0.0, %v943
  %945 = vmatmul.bf16.gmra.mxu0 %v575
  %v946 = vpop.f32.mrf.mxu0
  %v947 = vadd.f32 0.0, %v946
  %v948 = vpop.f32.mrf.mxu0
  %v949 = vadd.f32 0.0, %v948
  %950 = vmatmul.bf16.gmra.mxu0 %v578
  %v951 = vpop.f32.mrf.mxu0
  %v952 = vadd.f32 0.0, %v951
  %v953 = vpop.f32.mrf.mxu0
  %v954 = vadd.f32 0.0, %v953
  %955 = vmatmul.bf16.gmra.mxu0 %v581
  %v956 = vpop.f32.mrf.mxu0
  %v957 = vadd.f32 0.0, %v956
  %v958 = vpop.f32.mrf.mxu0
  %v959 = vadd.f32 0.0, %v958
  %960 = vmatmul.bf16.gmra.mxu0 %v584
  %v961 = vpop.f32.mrf.mxu0
  %v962 = vadd.f32 0.0, %v961
  %v963 = vpop.f32.mrf.mxu0
  %v964 = vadd.f32 0.0, %v963
  %965 = vmatmul.bf16.gmra.mxu0 %v587
  %v966 = vpop.f32.mrf.mxu0
  %v967 = vadd.f32 0.0, %v966
  %v968 = vpop.f32.mrf.mxu0
  %v969 = vadd.f32 0.0, %v968
  %970 = vmatmul.bf16.gmra.mxu0 %v590
  %v971 = vpop.f32.mrf.mxu0
  %v972 = vadd.f32 0.0, %v971
  %v973 = vpop.f32.mrf.mxu0
  %v974 = vadd.f32 0.0, %v973
  %975 = vmatmul.bf16.gmra.mxu0 %v593
  %v976 = vpop.f32.mrf.mxu0
  %v977 = vadd.f32 0.0, %v976
  %v978 = vpop.f32.mrf.mxu0
  %v979 = vadd.f32 0.0, %v978
  %980 = vmatmul.bf16.gmra.mxu0 %v596
  %v981 = vpop.f32.mrf.mxu0
  %v982 = vadd.f32 0.0, %v981
  %v983 = vpop.f32.mrf.mxu0
  %v984 = vadd.f32 0.0, %v983
  %985 = vmatmul.bf16.gmra.mxu0 %v599
  %v986 = vpop.f32.mrf.mxu0
  %v987 = vadd.f32 0.0, %v986
  %v988 = vpop.f32.mrf.mxu0
  %v989 = vadd.f32 0.0, %v988
  %990 = vmatmul.bf16.gmra.mxu0 %v602
  %v991 = vpop.f32.mrf.mxu0
  %v992 = vadd.f32 0.0, %v991
  %v993 = vpop.f32.mrf.mxu0
  %v994 = vadd.f32 0.0, %v993
  %995 = vmatmul.bf16.gmra.mxu0 %v814
  %v996 = vpop.f32.mrf.mxu0
  %v997 = vadd.f32 0.0, %v996
  %v998 = vpop.f32.mrf.mxu0
  %v999 = vadd.f32 0.0, %v998
  %1000 = vmatmul.bf16.gmra.mxu0 %v817
  %v1001 = vpop.f32.mrf.mxu0
  %v1002 = vadd.f32 0.0, %v1001
  %v1003 = vpop.f32.mrf.mxu0
  %v1004 = vadd.f32 0.0, %v1003
  %1005 = vmatmul.bf16.gmra.mxu0 %v820
  %v1006 = vpop.f32.mrf.mxu0
  %v1007 = vadd.f32 0.0, %v1006
  %v1008 = vpop.f32.mrf.mxu0
  %v1009 = vadd.f32 0.0, %v1008
  %1010 = vdwg.mxu0
  %v1011 = vadd.f32 %v614, %v832
  %v1012 = vadd.f32 %v616, %v834
  %v1013 = vadd.f32 %v619, %v837
  %v1014 = vadd.f32 %v621, %v839
  %v1015 = vadd.f32 %v624, %v842
  %v1016 = vadd.f32 %v626, %v844
  %v1017 = vadd.f32 %v629, %v847
  %v1018 = vadd.f32 %v631, %v849
  %v1019 = vadd.f32 %v634, %v852
  %v1020 = vadd.f32 %v636, %v854
  %v1021 = vadd.f32 %v639, %v857
  %v1022 = vadd.f32 %v641, %v859
  %v1023 = vadd.f32 %v644, %v862
  %v1024 = vadd.f32 %v646, %v864
  %v1025 = vadd.f32 %v649, %v867
  %v1026 = vadd.f32 %v651, %v869
  %v1027 = vadd.f32 %v654, %v872
  %v1028 = vadd.f32 %v656, %v874
  %v1029 = vadd.f32 %v659, %v877
  %v1030 = vadd.f32 %v661, %v879
  %v1031 = vadd.f32 %v664, %v882
  %v1032 = vadd.f32 %v666, %v884
  %v1033 = vadd.f32 %v669, %v887
  %v1034 = vadd.f32 %v671, %v889
  %v1035 = vadd.f32 %v674, %v892
  %v1036 = vadd.f32 %v676, %v894
  %v1037 = vadd.f32 %v679, %v897
  %v1038 = vadd.f32 %v681, %v899
  %v1039 = vadd.f32 %v684, %v902
  %v1040 = vadd.f32 %v686, %v904
  %v1041 = vadd.f32 %v689, %v907
  %v1042 = vadd.f32 %v691, %v909
  %v1043 = vadd.f32 %v694, %v912
  %v1044 = vadd.f32 %v696, %v914
  %v1045 = vadd.f32 %v699, %v917
  %v1046 = vadd.f32 %v701, %v919
  %v1047 = vadd.f32 %v704, %v922
  %v1048 = vadd.f32 %v706, %v924
  %v1049 = vadd.f32 %v709, %v927
  %v1050 = vadd.f32 %v711, %v929
  %v1051 = vadd.f32 %v714, %v932
  %v1052 = vadd.f32 %v716, %v934
  %v1053 = vadd.f32 %v719, %v937
  %v1054 = vadd.f32 %v721, %v939
  %v1055 = vadd.f32 %v724, %v942
  %v1056 = vadd.f32 %v726, %v944
  %v1057 = vadd.f32 %v729, %v947
  %v1058 = vadd.f32 %v731, %v949
  %v1059 = vadd.f32 %v734, %v952
  %v1060 = vadd.f32 %v736, %v954
  %v1061 = vadd.f32 %v739, %v957
  %v1062 = vadd.f32 %v741, %v959
  %v1063 = vadd.f32 %v744, %v962
  %v1064 = vadd.f32 %v746, %v964
  %v1065 = vadd.f32 %v749, %v967
  %v1066 = vadd.f32 %v751, %v969
  %v1067 = vadd.f32 %v754, %v972
  %v1068 = vadd.f32 %v756, %v974
  %v1069 = vadd.f32 %v759, %v977
  %v1070 = vadd.f32 %v761, %v979
  %v1071 = vadd.f32 %v764, %v982
  %v1072 = vadd.f32 %v766, %v984
  %v1073 = vadd.f32 %v769, %v987
  %v1074 = vadd.f32 %v771, %v989
  %v1075 = vadd.f32 %v774, %v992
  %v1076 = vadd.f32 %v776, %v994
  %v1077 = vadd.f32 %v779, %v997
  %v1078 = vadd.f32 %v781, %v999
  %v1079 = vadd.f32 %v784, %v1002
  %v1080 = vadd.f32 %v786, %v1004
  %v1081 = vadd.f32 %v789, %v1007
  %v1082 = vadd.f32 %v791, %v1009
  %v1083 = vld [vmem:[%s0 + $0x1] sm:$0xff]
  %v1084 = vld [vmem:[%s0 + $0x9] sm:$0xff]
  %v1085 = vld [vmem:[%s0 + $0x11] sm:$0xff]
  %v1086 = vld [vmem:[%s0 + $0x21] sm:$0xff]
  %v1087 = vld [vmem:[%s0 + $0x29] sm:$0xff]
  %v1088 = vld [vmem:[%s0 + $0x31] sm:$0xff]
  %v1089 = vld [vmem:[%s0 + $0x41] sm:$0xff]
  %v1090 = vld [vmem:[%s0 + $0x49] sm:$0xff]
  %v1091 = vld [vmem:[%s0 + $0x51] sm:$0xff]
  %v1092 = vld [vmem:[%s0 + $0x61] sm:$0xff]
  %v1093 = vld [vmem:[%s0 + $0x69] sm:$0xff]
  %v1094 = vld [vmem:[%s0 + $0x71] sm:$0xff]
  %v1095 = vld [vmem:[%s0 + $0x81] sm:$0xff]
  %v1096 = vld [vmem:[%s0 + $0x89] sm:$0xff]
  %v1097 = vld [vmem:[%s0 + $0x91] sm:$0xff]
  %v1098 = vld [vmem:[%s0 + $0xa1] sm:$0xff]
  %v1099 = vld [vmem:[%s0 + $0xa9] sm:$0xff]
  %v1100 = vld [vmem:[%s0 + $0xb1] sm:$0xff]
  %v1101 = vld [vmem:[%s0 + $0xc1] sm:$0xff]
  %v1102 = vld [vmem:[%s0 + $0xc9] sm:$0xff]
  %v1103 = vld [vmem:[%s0 + $0xd1] sm:$0xff]
  %v1104 = vld [vmem:[%s0 + $0xe1] sm:$0xff]
  %v1105 = vld [vmem:[%s0 + $0xe9] sm:$0xff]
  %v1106 = vld [vmem:[%s0 + $0xf1] sm:$0xff]
  %v1107 = vld [vmem:[%s0 + $0x101] sm:$0xff]
  %v1108 = vld [vmem:[%s0 + $0x109] sm:$0xff]
  %v1109 = vld [vmem:[%s0 + $0x111] sm:$0xff]
  %v1110 = vld [vmem:[%s0 + $0x121] sm:$0xff]
  %v1111 = vld [vmem:[%s0 + $0x129] sm:$0xff]
  %v1112 = vld [vmem:[%s0 + $0x131] sm:$0xff]
  %v1113 = vld [vmem:[%s0 + $0x141] sm:$0xff]
  %v1114 = vld [vmem:[%s0 + $0x149] sm:$0xff]
  %v1115 = vld [vmem:[%s0 + $0x151] sm:$0xff]
  %v1116 = vld [vmem:[%s0 + $0x161] sm:$0xff]
  %v1117 = vld [vmem:[%s0 + $0x169] sm:$0xff]
  %v1118 = vld [vmem:[%s0 + $0x171] sm:$0xff]
  %v1119 = vld [vmem:[%s0 + $0x181] sm:$0xff]
  %v1120 = vld [vmem:[%s0 + $0x189] sm:$0xff]
  %v1121 = vld [vmem:[%s0 + $0x191] sm:$0xff]
  %v1122 = vld [vmem:[%s0 + $0x1a1] sm:$0xff]
  %v1123 = vld [vmem:[%s0 + $0x1a9] sm:$0xff]
  %v1124 = vld [vmem:[%s0 + $0x1b1] sm:$0xff]
  %v1125 = vld [vmem:[%s0 + $0x1c1] sm:$0xff]
  %v1126 = vld [vmem:[%s0 + $0x1c9] sm:$0xff]
  %v1127 = vld [vmem:[%s0 + $0x1d1] sm:$0xff]
  %v1128 = vld [vmem:[%s0 + $0x1e1] sm:$0xff]
  %v1129 = vld [vmem:[%s0 + $0x1e9] sm:$0xff]
  %v1130 = vld [vmem:[%s0 + $0x1f1] sm:$0xff]
  %v1131 = vld [vmem:[%s0 + $0x201] sm:$0xff]
  %v1132 = vld [vmem:[%s0 + $0x209] sm:$0xff]
  %v1133 = vld [vmem:[%s0 + $0x211] sm:$0xff]
  %v1134 = vld [vmem:[%s0 + $0x221] sm:$0xff]
  %v1135 = vld [vmem:[%s0 + $0x229] sm:$0xff]
  %v1136 = vld [vmem:[%s0 + $0x231] sm:$0xff]
  %v1137 = vld [vmem:[%s0 + $0x241] sm:$0xff]
  %v1138 = vld [vmem:[%s0 + $0x249] sm:$0xff]
  %v1139 = vld [vmem:[%s0 + $0x251] sm:$0xff]
  %v1140 = vld [vmem:[%s0 + $0x261] sm:$0xff]
  %v1141 = vld [vmem:[%s0 + $0x269] sm:$0xff]
  %v1142 = vld [vmem:[%s0 + $0x271] sm:$0xff]
  %v1143 = vld [vmem:[%s0 + $0x281] sm:$0xff]
  %v1144 = vld [vmem:[%s0 + $0x289] sm:$0xff]
  %v1145 = vld [vmem:[%s0 + $0x291] sm:$0xff]
  %v1146 = vld [vmem:[%s0 + $0x2a1] sm:$0xff]
  %v1147 = vld [vmem:[%s0 + $0x2a9] sm:$0xff]
  %v1148 = vld [vmem:[%s0 + $0x2b1] sm:$0xff]
  %v1149 = vld [vmem:[%s0 + $0x2c1] sm:$0xff]
  %v1150 = vld [vmem:[%s0 + $0x2c9] sm:$0xff]
  %v1151 = vld [vmem:[%s0 + $0x2d1] sm:$0xff]
  %v1152 = vld [vmem:[%s0 + $0x2e1] sm:$0xff]
  %v1153 = vld [vmem:[%s0 + $0x2e9] sm:$0xff]
  %v1154 = vld [vmem:[%s0 + $0x2f1] sm:$0xff]
  %v1155 = vld [vmem:[%s0 + $0x301] sm:$0xff]
  %v1156 = vld [vmem:[%s0 + $0x309] sm:$0xff]
  %v1157 = vld [vmem:[%s0 + $0x311] sm:$0xff]
  %v1158 = vld [vmem:[%s0 + $0x321] sm:$0xff]
  %v1159 = vld [vmem:[%s0 + $0x329] sm:$0xff]
  %v1160 = vld [vmem:[%s0 + $0x331] sm:$0xff]
  %v1161 = vpack.c.bf16 %v1084, %v1083
  %v1162 = vpack.c.bf16 %v1086, %v1085
  %v1163 = vpack.c.bf16 %v1088, %v1087
  %v1164 = vpack.c.bf16 %v1090, %v1089
  %v1165 = vpack.c.bf16 %v1092, %v1091
  %v1166 = vpack.c.bf16 %v1094, %v1093
  %v1167 = vpack.c.bf16 %v1096, %v1095
  %v1168 = vpack.c.bf16 %v1098, %v1097
  %v1169 = vpack.c.bf16 %v1100, %v1099
  %v1170 = vpack.c.bf16 %v1102, %v1101
  %v1171 = vpack.c.bf16 %v1104, %v1103
  %v1172 = vpack.c.bf16 %v1106, %v1105
  %v1173 = vpack.c.bf16 %v1108, %v1107
  %v1174 = vpack.c.bf16 %v1110, %v1109
  %v1175 = vpack.c.bf16 %v1112, %v1111
  %v1176 = vpack.c.bf16 %v1114, %v1113
  %v1177 = vpack.c.bf16 %v1116, %v1115
  %v1178 = vpack.c.bf16 %v1118, %v1117
  %v1179 = vpack.c.bf16 %v1120, %v1119
  %v1180 = vpack.c.bf16 %v1122, %v1121
  %v1181 = vpack.c.bf16 %v1124, %v1123
  %v1182 = vpack.c.bf16 %v1126, %v1125
  %v1183 = vpack.c.bf16 %v1128, %v1127
  %v1184 = vpack.c.bf16 %v1130, %v1129
  %v1185 = vpack.c.bf16 %v1132, %v1131
  %v1186 = vpack.c.bf16 %v1134, %v1133
  %v1187 = vpack.c.bf16 %v1136, %v1135
  %v1188 = vpack.c.bf16 %v1138, %v1137
  %v1189 = vpack.c.bf16 %v1140, %v1139
  %v1190 = vpack.c.bf16 %v1142, %v1141
  %v1191 = vpack.c.bf16 %v1144, %v1143
  %v1192 = vpack.c.bf16 %v1146, %v1145
  %v1193 = vpack.c.bf16 %v1148, %v1147
  %v1194 = vpack.c.bf16 %v1150, %v1149
  %v1195 = vpack.c.bf16 %v1152, %v1151
  %v1196 = vpack.c.bf16 %v1154, %v1153
  %s1197 = scalar_lea.vmem %s1, 16
  %v1198 = vld [vmem:[%s1197] sm:$0xf]
  %v1199 = vld [vmem:[%s1197 + $0x4] sm:$0xf]
  %v1200 = vld [vmem:[%s1197 + $0x8] sm:$0xf]
  %v1201 = vld [vmem:[%s1197 + $0xc] sm:$0xf]
  %v1206 = vunpack.c.l.b16 %v1198
  %v1207 = vunpack.c.l.b16 %v1199
  %v1208 = vunpack.c.l.b16 %v1200
  %v1209 = vunpack.c.l.b16 %v1201
  %v1210 = vpack.c.b16 %v1207, %v1206
  %v1211 = vpack.c.b16 %v1209, %v1208
  %v1215 = vsel %vm186, %v1161, 0
  %v1218 = vsel %vm186, %v1162, 0
  %v1221 = vsel %vm186, %v1163, 0
  %v1224 = vsel %vm186, %v1164, 0
  %v1227 = vsel %vm186, %v1165, 0
  %v1230 = vsel %vm186, %v1166, 0
  %v1233 = vsel %vm186, %v1167, 0
  %v1236 = vsel %vm186, %v1168, 0
  %v1239 = vsel %vm186, %v1169, 0
  %v1242 = vsel %vm186, %v1170, 0
  %v1245 = vsel %vm186, %v1171, 0
  %v1248 = vsel %vm186, %v1172, 0
  %v1251 = vsel %vm186, %v1173, 0
  %v1254 = vsel %vm186, %v1174, 0
  %v1257 = vsel %vm186, %v1175, 0
  %v1260 = vsel %vm186, %v1176, 0
  %v1263 = vsel %vm186, %v1177, 0
  %v1266 = vsel %vm186, %v1178, 0
  %v1269 = vsel %vm186, %v1179, 0
  %v1272 = vsel %vm186, %v1180, 0
  %v1275 = vsel %vm186, %v1181, 0
  %v1278 = vsel %vm186, %v1182, 0
  %v1281 = vsel %vm186, %v1183, 0
  %v1284 = vsel %vm186, %v1184, 0
  %v1287 = vsel %vm186, %v1185, 0
  %v1290 = vsel %vm186, %v1186, 0
  %v1293 = vsel %vm186, %v1187, 0
  %v1296 = vsel %vm186, %v1188, 0
  %v1299 = vsel %vm186, %v1189, 0
  %v1302 = vsel %vm186, %v1190, 0
  %v1305 = vsel %vm186, %v1191, 0
  %v1308 = vsel %vm186, %v1192, 0
  %v1311 = vsel %vm186, %v1193, 0
  %v1314 = vsel %vm186, %v1194, 0
  %v1317 = vsel %vm186, %v1195, 0
  %v1320 = vsel %vm186, %v1196, 0
  %1322 = vmatpush.bf16.msra.mxu0 0
  %1323 = vmatpush.bf16.msra.mxu0 0
  %1324 = vmatpush.bf16.msra.mxu0 0
  %1325 = vmatpush.bf16.msra.mxu0 0
  %1326 = vmatpush.bf16.msra.mxu0 0
  %1327 = vmatpush.bf16.msra.mxu0 0
  %1328 = vmatpush.bf16.msra.mxu0 %v1211
  %1329 = vmatpush.bf16.msra.mxu0 %v1210
  %1330 = vmatmul.bf16.gmra.mxu0 %v1215
  %v1331 = vpop.f32.mrf.mxu0
  %v1332 = vadd.f32 0.0, %v1331
  %v1333 = vpop.f32.mrf.mxu0
  %v1334 = vadd.f32 0.0, %v1333
  %1335 = vmatmul.bf16.gmra.mxu0 %v1218
  %v1336 = vpop.f32.mrf.mxu0
  %v1337 = vadd.f32 0.0, %v1336
  %v1338 = vpop.f32.mrf.mxu0
  %v1339 = vadd.f32 0.0, %v1338
  %1340 = vmatmul.bf16.gmra.mxu0 %v1221
  %v1341 = vpop.f32.mrf.mxu0
  %v1342 = vadd.f32 0.0, %v1341
  %v1343 = vpop.f32.mrf.mxu0
  %v1344 = vadd.f32 0.0, %v1343
  %1345 = vmatmul.bf16.gmra.mxu0 %v1224
  %v1346 = vpop.f32.mrf.mxu0
  %v1347 = vadd.f32 0.0, %v1346
  %v1348 = vpop.f32.mrf.mxu0
  %v1349 = vadd.f32 0.0, %v1348
  %1350 = vmatmul.bf16.gmra.mxu0 %v1227
  %v1351 = vpop.f32.mrf.mxu0
  %v1352 = vadd.f32 0.0, %v1351
  %v1353 = vpop.f32.mrf.mxu0
  %v1354 = vadd.f32 0.0, %v1353
  %1355 = vmatmul.bf16.gmra.mxu0 %v1230
  %v1356 = vpop.f32.mrf.mxu0
  %v1357 = vadd.f32 0.0, %v1356
  %v1358 = vpop.f32.mrf.mxu0
  %v1359 = vadd.f32 0.0, %v1358
  %1360 = vmatmul.bf16.gmra.mxu0 %v1233
  %v1361 = vpop.f32.mrf.mxu0
  %v1362 = vadd.f32 0.0, %v1361
  %v1363 = vpop.f32.mrf.mxu0
  %v1364 = vadd.f32 0.0, %v1363
  %1365 = vmatmul.bf16.gmra.mxu0 %v1236
  %v1366 = vpop.f32.mrf.mxu0
  %v1367 = vadd.f32 0.0, %v1366
  %v1368 = vpop.f32.mrf.mxu0
  %v1369 = vadd.f32 0.0, %v1368
  %1370 = vmatmul.bf16.gmra.mxu0 %v1239
  %v1371 = vpop.f32.mrf.mxu0
  %v1372 = vadd.f32 0.0, %v1371
  %v1373 = vpop.f32.mrf.mxu0
  %v1374 = vadd.f32 0.0, %v1373
  %1375 = vmatmul.bf16.gmra.mxu0 %v1242
  %v1376 = vpop.f32.mrf.mxu0
  %v1377 = vadd.f32 0.0, %v1376
  %v1378 = vpop.f32.mrf.mxu0
  %v1379 = vadd.f32 0.0, %v1378
  %1380 = vmatmul.bf16.gmra.mxu0 %v1245
  %v1381 = vpop.f32.mrf.mxu0
  %v1382 = vadd.f32 0.0, %v1381
  %v1383 = vpop.f32.mrf.mxu0
  %v1384 = vadd.f32 0.0, %v1383
  %1385 = vmatmul.bf16.gmra.mxu0 %v1248
  %v1386 = vpop.f32.mrf.mxu0
  %v1387 = vadd.f32 0.0, %v1386
  %v1388 = vpop.f32.mrf.mxu0
  %v1389 = vadd.f32 0.0, %v1388
  %1390 = vmatmul.bf16.gmra.mxu0 %v1251
  %v1391 = vpop.f32.mrf.mxu0
  %v1392 = vadd.f32 0.0, %v1391
  %v1393 = vpop.f32.mrf.mxu0
  %v1394 = vadd.f32 0.0, %v1393
  %1395 = vmatmul.bf16.gmra.mxu0 %v1254
  %v1396 = vpop.f32.mrf.mxu0
  %v1397 = vadd.f32 0.0, %v1396
  %v1398 = vpop.f32.mrf.mxu0
  %v1399 = vadd.f32 0.0, %v1398
  %1400 = vmatmul.bf16.gmra.mxu0 %v1257
  %v1401 = vpop.f32.mrf.mxu0
  %v1402 = vadd.f32 0.0, %v1401
  %v1403 = vpop.f32.mrf.mxu0
  %v1404 = vadd.f32 0.0, %v1403
  %1405 = vmatmul.bf16.gmra.mxu0 %v1260
  %v1406 = vpop.f32.mrf.mxu0
  %v1407 = vadd.f32 0.0, %v1406
  %v1408 = vpop.f32.mrf.mxu0
  %v1409 = vadd.f32 0.0, %v1408
  %1410 = vmatmul.bf16.gmra.mxu0 %v1263
  %v1411 = vpop.f32.mrf.mxu0
  %v1412 = vadd.f32 0.0, %v1411
  %v1413 = vpop.f32.mrf.mxu0
  %v1414 = vadd.f32 0.0, %v1413
  %1415 = vmatmul.bf16.gmra.mxu0 %v1266
  %v1416 = vpop.f32.mrf.mxu0
  %v1417 = vadd.f32 0.0, %v1416
  %v1418 = vpop.f32.mrf.mxu0
  %v1419 = vadd.f32 0.0, %v1418
  %1420 = vmatmul.bf16.gmra.mxu0 %v1269
  %v1421 = vpop.f32.mrf.mxu0
  %v1422 = vadd.f32 0.0, %v1421
  %v1423 = vpop.f32.mrf.mxu0
  %v1424 = vadd.f32 0.0, %v1423
  %1425 = vmatmul.bf16.gmra.mxu0 %v1272
  %v1426 = vpop.f32.mrf.mxu0
  %v1427 = vadd.f32 0.0, %v1426
  %v1428 = vpop.f32.mrf.mxu0
  %v1429 = vadd.f32 0.0, %v1428
  %1430 = vmatmul.bf16.gmra.mxu0 %v1275
  %v1431 = vpop.f32.mrf.mxu0
  %v1432 = vadd.f32 0.0, %v1431
  %v1433 = vpop.f32.mrf.mxu0
  %v1434 = vadd.f32 0.0, %v1433
  %1435 = vmatmul.bf16.gmra.mxu0 %v1278
  %v1436 = vpop.f32.mrf.mxu0
  %v1437 = vadd.f32 0.0, %v1436
  %v1438 = vpop.f32.mrf.mxu0
  %v1439 = vadd.f32 0.0, %v1438
  %1440 = vmatmul.bf16.gmra.mxu0 %v1281
  %v1441 = vpop.f32.mrf.mxu0
  %v1442 = vadd.f32 0.0, %v1441
  %v1443 = vpop.f32.mrf.mxu0
  %v1444 = vadd.f32 0.0, %v1443
  %1445 = vmatmul.bf16.gmra.mxu0 %v1284
  %v1446 = vpop.f32.mrf.mxu0
  %v1447 = vadd.f32 0.0, %v1446
  %v1448 = vpop.f32.mrf.mxu0
  %v1449 = vadd.f32 0.0, %v1448
  %1450 = vmatmul.bf16.gmra.mxu0 %v1287
  %v1451 = vpop.f32.mrf.mxu0
  %v1452 = vadd.f32 0.0, %v1451
  %v1453 = vpop.f32.mrf.mxu0
  %v1454 = vadd.f32 0.0, %v1453
  %1455 = vmatmul.bf16.gmra.mxu0 %v1290
  %v1456 = vpop.f32.mrf.mxu0
  %v1457 = vadd.f32 0.0, %v1456
  %v1458 = vpop.f32.mrf.mxu0
  %v1459 = vadd.f32 0.0, %v1458
  %1460 = vmatmul.bf16.gmra.mxu0 %v1293
  %v1461 = vpop.f32.mrf.mxu0
  %v1462 = vadd.f32 0.0, %v1461
  %v1463 = vpop.f32.mrf.mxu0
  %v1464 = vadd.f32 0.0, %v1463
  %1465 = vmatmul.bf16.gmra.mxu0 %v1296
  %v1466 = vpop.f32.mrf.mxu0
  %v1467 = vadd.f32 0.0, %v1466
  %v1468 = vpop.f32.mrf.mxu0
  %v1469 = vadd.f32 0.0, %v1468
  %1470 = vmatmul.bf16.gmra.mxu0 %v1299
  %v1471 = vpop.f32.mrf.mxu0
  %v1472 = vadd.f32 0.0, %v1471
  %v1473 = vpop.f32.mrf.mxu0
  %v1474 = vadd.f32 0.0, %v1473
  %1475 = vmatmul.bf16.gmra.mxu0 %v1302
  %v1476 = vpop.f32.mrf.mxu0
  %v1477 = vadd.f32 0.0, %v1476
  %v1478 = vpop.f32.mrf.mxu0
  %v1479 = vadd.f32 0.0, %v1478
  %1480 = vmatmul.bf16.gmra.mxu0 %v1305
  %v1481 = vpop.f32.mrf.mxu0
  %v1482 = vadd.f32 0.0, %v1481
  %v1483 = vpop.f32.mrf.mxu0
  %v1484 = vadd.f32 0.0, %v1483
  %1485 = vmatmul.bf16.gmra.mxu0 %v1308
  %v1486 = vpop.f32.mrf.mxu0
  %v1487 = vadd.f32 0.0, %v1486
  %v1488 = vpop.f32.mrf.mxu0
  %v1489 = vadd.f32 0.0, %v1488
  %1490 = vmatmul.bf16.gmra.mxu0 %v1311
  %v1491 = vpop.f32.mrf.mxu0
  %v1492 = vadd.f32 0.0, %v1491
  %v1493 = vpop.f32.mrf.mxu0
  %v1494 = vadd.f32 0.0, %v1493
  %1495 = vmatmul.bf16.gmra.mxu0 %v1314
  %v1496 = vpop.f32.mrf.mxu0
  %v1497 = vadd.f32 0.0, %v1496
  %v1498 = vpop.f32.mrf.mxu0
  %v1499 = vadd.f32 0.0, %v1498
  %1500 = vmatmul.bf16.gmra.mxu0 %v1317
  %v1501 = vpop.f32.mrf.mxu0
  %v1502 = vadd.f32 0.0, %v1501
  %v1503 = vpop.f32.mrf.mxu0
  %v1504 = vadd.f32 0.0, %v1503
  %1505 = vmatmul.bf16.gmra.mxu0 %v1320
  %v1506 = vpop.f32.mrf.mxu0
  %v1507 = vadd.f32 0.0, %v1506
  %v1508 = vpop.f32.mrf.mxu0
  %v1509 = vadd.f32 0.0, %v1508
  %1510 = vdwg.mxu0
  %v1511 = vadd.f32 %v1011, %v1332
  %v1512 = vadd.f32 %v1012, %v1334
  %v1513 = vadd.f32 %v1013, %v1337
  %v1514 = vadd.f32 %v1014, %v1339
  %v1515 = vadd.f32 %v1015, %v1342
  %v1516 = vadd.f32 %v1016, %v1344
  %v1517 = vadd.f32 %v1017, %v1347
  %v1518 = vadd.f32 %v1018, %v1349
  %v1519 = vadd.f32 %v1019, %v1352
  %v1520 = vadd.f32 %v1020, %v1354
  %v1521 = vadd.f32 %v1021, %v1357
  %v1522 = vadd.f32 %v1022, %v1359
  %v1523 = vadd.f32 %v1023, %v1362
  %v1524 = vadd.f32 %v1024, %v1364
  %v1525 = vadd.f32 %v1025, %v1367
  %v1526 = vadd.f32 %v1026, %v1369
  %v1527 = vadd.f32 %v1027, %v1372
  %v1528 = vadd.f32 %v1028, %v1374
  %v1529 = vadd.f32 %v1029, %v1377
  %v1530 = vadd.f32 %v1030, %v1379
  %v1531 = vadd.f32 %v1031, %v1382
  %v1532 = vadd.f32 %v1032, %v1384
  %v1533 = vadd.f32 %v1033, %v1387
  %v1534 = vadd.f32 %v1034, %v1389
  %v1535 = vadd.f32 %v1035, %v1392
  %v1536 = vadd.f32 %v1036, %v1394
  %v1537 = vadd.f32 %v1037, %v1397
  %v1538 = vadd.f32 %v1038, %v1399
  %v1539 = vadd.f32 %v1039, %v1402
  %v1540 = vadd.f32 %v1040, %v1404
  %v1541 = vadd.f32 %v1041, %v1407
  %v1542 = vadd.f32 %v1042, %v1409
  %v1543 = vadd.f32 %v1043, %v1412
  %v1544 = vadd.f32 %v1044, %v1414
  %v1545 = vadd.f32 %v1045, %v1417
  %v1546 = vadd.f32 %v1046, %v1419
  %v1547 = vadd.f32 %v1047, %v1422
  %v1548 = vadd.f32 %v1048, %v1424
  %v1549 = vadd.f32 %v1049, %v1427
  %v1550 = vadd.f32 %v1050, %v1429
  %v1551 = vadd.f32 %v1051, %v1432
  %v1552 = vadd.f32 %v1052, %v1434
  %v1553 = vadd.f32 %v1053, %v1437
  %v1554 = vadd.f32 %v1054, %v1439
  %v1555 = vadd.f32 %v1055, %v1442
  %v1556 = vadd.f32 %v1056, %v1444
  %v1557 = vadd.f32 %v1057, %v1447
  %v1558 = vadd.f32 %v1058, %v1449
  %v1559 = vadd.f32 %v1059, %v1452
  %v1560 = vadd.f32 %v1060, %v1454
  %v1561 = vadd.f32 %v1061, %v1457
  %v1562 = vadd.f32 %v1062, %v1459
  %v1563 = vadd.f32 %v1063, %v1462
  %v1564 = vadd.f32 %v1064, %v1464
  %v1565 = vadd.f32 %v1065, %v1467
  %v1566 = vadd.f32 %v1066, %v1469
  %v1567 = vadd.f32 %v1067, %v1472
  %v1568 = vadd.f32 %v1068, %v1474
  %v1569 = vadd.f32 %v1069, %v1477
  %v1570 = vadd.f32 %v1070, %v1479
  %v1571 = vadd.f32 %v1071, %v1482
  %v1572 = vadd.f32 %v1072, %v1484
  %v1573 = vadd.f32 %v1073, %v1487
  %v1574 = vadd.f32 %v1074, %v1489
  %v1575 = vadd.f32 %v1075, %v1492
  %v1576 = vadd.f32 %v1076, %v1494
  %v1577 = vadd.f32 %v1077, %v1497
  %v1578 = vadd.f32 %v1078, %v1499
  %v1579 = vadd.f32 %v1079, %v1502
  %v1580 = vadd.f32 %v1080, %v1504
  %v1581 = vadd.f32 %v1081, %v1507
  %v1582 = vadd.f32 %v1082, %v1509
  %v1583 = vpack.c.bf16 %v1087, %v1086
  %v1584 = vpack.c.bf16 %v1089, %v1088
  %v1585 = vpack.c.bf16 %v1091, %v1090
  %v1586 = vpack.c.bf16 %v1093, %v1092
  %v1587 = vpack.c.bf16 %v1095, %v1094
  %v1588 = vpack.c.bf16 %v1097, %v1096
  %v1589 = vpack.c.bf16 %v1099, %v1098
  %v1590 = vpack.c.bf16 %v1101, %v1100
  %v1591 = vpack.c.bf16 %v1103, %v1102
  %v1592 = vpack.c.bf16 %v1105, %v1104
  %v1593 = vpack.c.bf16 %v1107, %v1106
  %v1594 = vpack.c.bf16 %v1109, %v1108
  %v1595 = vpack.c.bf16 %v1111, %v1110
  %v1596 = vpack.c.bf16 %v1113, %v1112
  %v1597 = vpack.c.bf16 %v1115, %v1114
  %v1598 = vpack.c.bf16 %v1117, %v1116
  %v1599 = vpack.c.bf16 %v1119, %v1118
  %v1600 = vpack.c.bf16 %v1121, %v1120
  %v1601 = vpack.c.bf16 %v1123, %v1122
  %v1602 = vpack.c.bf16 %v1125, %v1124
  %v1603 = vpack.c.bf16 %v1127, %v1126
  %v1604 = vpack.c.bf16 %v1129, %v1128
  %v1605 = vpack.c.bf16 %v1131, %v1130
  %v1606 = vpack.c.bf16 %v1133, %v1132
  %v1607 = vpack.c.bf16 %v1135, %v1134
  %v1608 = vpack.c.bf16 %v1137, %v1136
  %v1609 = vpack.c.bf16 %v1139, %v1138
  %v1610 = vpack.c.bf16 %v1141, %v1140
  %v1611 = vpack.c.bf16 %v1143, %v1142
  %v1612 = vpack.c.bf16 %v1145, %v1144
  %v1613 = vpack.c.bf16 %v1147, %v1146
  %v1614 = vpack.c.bf16 %v1149, %v1148
  %v1615 = vpack.c.bf16 %v1151, %v1150
  %v1616 = vpack.c.bf16 %v1153, %v1152
  %v1617 = vpack.c.bf16 %v1155, %v1154
  %v1618 = vpack.c.bf16 %v1157, %v1156
  %s1619 = scalar_lea.vmem %s1, 64
  %v1620 = vld [vmem:[%s1619] sm:$0xf]
  %v1621 = vld [vmem:[%s1619 + $0x4] sm:$0xf]
  %v1622 = vld [vmem:[%s1619 + $0x8] sm:$0xf]
  %v1623 = vld [vmem:[%s1619 + $0xc] sm:$0xf]
  %v1628 = vunpack.c.l.b16 %v1620
  %v1629 = vunpack.c.l.b16 %v1621
  %v1630 = vunpack.c.l.b16 %v1622
  %v1631 = vunpack.c.l.b16 %v1623
  %v1632 = vpack.c.b16 %v1629, %v1628
  %v1633 = vpack.c.b16 %v1631, %v1630
  %v1637 = vsel %vm186, %v1583, 0
  %v1640 = vsel %vm186, %v1584, 0
  %v1643 = vsel %vm186, %v1585, 0
  %v1646 = vsel %vm186, %v1586, 0
  %v1649 = vsel %vm186, %v1587, 0
  %v1652 = vsel %vm186, %v1588, 0
  %v1655 = vsel %vm186, %v1589, 0
  %v1658 = vsel %vm186, %v1590, 0
  %v1661 = vsel %vm186, %v1591, 0
  %v1664 = vsel %vm186, %v1592, 0
  %v1667 = vsel %vm186, %v1593, 0
  %v1670 = vsel %vm186, %v1594, 0
  %v1673 = vsel %vm186, %v1595, 0
  %v1676 = vsel %vm186, %v1596, 0
  %v1679 = vsel %vm186, %v1597, 0
  %v1682 = vsel %vm186, %v1598, 0
  %v1685 = vsel %vm186, %v1599, 0
  %v1688 = vsel %vm186, %v1600, 0
  %v1691 = vsel %vm186, %v1601, 0
  %v1694 = vsel %vm186, %v1602, 0
  %v1697 = vsel %vm186, %v1603, 0
  %v1700 = vsel %vm186, %v1604, 0
  %v1703 = vsel %vm186, %v1605, 0
  %v1706 = vsel %vm186, %v1606, 0
  %v1709 = vsel %vm186, %v1607, 0
  %v1712 = vsel %vm186, %v1608, 0
  %v1715 = vsel %vm186, %v1609, 0
  %v1718 = vsel %vm186, %v1610, 0
  %v1721 = vsel %vm186, %v1611, 0
  %v1724 = vsel %vm186, %v1612, 0
  %v1727 = vsel %vm186, %v1613, 0
  %v1730 = vsel %vm186, %v1614, 0
  %v1733 = vsel %vm186, %v1615, 0
  %v1736 = vsel %vm186, %v1616, 0
  %v1739 = vsel %vm186, %v1617, 0
  %v1742 = vsel %vm186, %v1618, 0
  %1744 = vmatpush.bf16.msra.mxu0 0
  %1745 = vmatpush.bf16.msra.mxu0 0
  %1746 = vmatpush.bf16.msra.mxu0 0
  %1747 = vmatpush.bf16.msra.mxu0 0
  %1748 = vmatpush.bf16.msra.mxu0 0
  %1749 = vmatpush.bf16.msra.mxu0 0
  %1750 = vmatpush.bf16.msra.mxu0 %v1633
  %1751 = vmatpush.bf16.msra.mxu0 %v1632
  %1752 = vmatmul.bf16.gmra.mxu0 %v1637
  %v1753 = vpop.f32.mrf.mxu0
  %v1754 = vadd.f32 0.0, %v1753
  %v1755 = vpop.f32.mrf.mxu0
  %v1756 = vadd.f32 0.0, %v1755
  %1757 = vmatmul.bf16.gmra.mxu0 %v1640
  %v1758 = vpop.f32.mrf.mxu0
  %v1759 = vadd.f32 0.0, %v1758
  %v1760 = vpop.f32.mrf.mxu0
  %v1761 = vadd.f32 0.0, %v1760
  %1762 = vmatmul.bf16.gmra.mxu0 %v1643
  %v1763 = vpop.f32.mrf.mxu0
  %v1764 = vadd.f32 0.0, %v1763
  %v1765 = vpop.f32.mrf.mxu0
  %v1766 = vadd.f32 0.0, %v1765
  %1767 = vmatmul.bf16.gmra.mxu0 %v1646
  %v1768 = vpop.f32.mrf.mxu0
  %v1769 = vadd.f32 0.0, %v1768
  %v1770 = vpop.f32.mrf.mxu0
  %v1771 = vadd.f32 0.0, %v1770
  %1772 = vmatmul.bf16.gmra.mxu0 %v1649
  %v1773 = vpop.f32.mrf.mxu0
  %v1774 = vadd.f32 0.0, %v1773
  %v1775 = vpop.f32.mrf.mxu0
  %v1776 = vadd.f32 0.0, %v1775
  %1777 = vmatmul.bf16.gmra.mxu0 %v1652
  %v1778 = vpop.f32.mrf.mxu0
  %v1779 = vadd.f32 0.0, %v1778
  %v1780 = vpop.f32.mrf.mxu0
  %v1781 = vadd.f32 0.0, %v1780
  %1782 = vmatmul.bf16.gmra.mxu0 %v1655
  %v1783 = vpop.f32.mrf.mxu0
  %v1784 = vadd.f32 0.0, %v1783
  %v1785 = vpop.f32.mrf.mxu0
  %v1786 = vadd.f32 0.0, %v1785
  %1787 = vmatmul.bf16.gmra.mxu0 %v1658
  %v1788 = vpop.f32.mrf.mxu0
  %v1789 = vadd.f32 0.0, %v1788
  %v1790 = vpop.f32.mrf.mxu0
  %v1791 = vadd.f32 0.0, %v1790
  %1792 = vmatmul.bf16.gmra.mxu0 %v1661
  %v1793 = vpop.f32.mrf.mxu0
  %v1794 = vadd.f32 0.0, %v1793
  %v1795 = vpop.f32.mrf.mxu0
  %v1796 = vadd.f32 0.0, %v1795
  %1797 = vmatmul.bf16.gmra.mxu0 %v1664
  %v1798 = vpop.f32.mrf.mxu0
  %v1799 = vadd.f32 0.0, %v1798
  %v1800 = vpop.f32.mrf.mxu0
  %v1801 = vadd.f32 0.0, %v1800
  %1802 = vmatmul.bf16.gmra.mxu0 %v1667
  %v1803 = vpop.f32.mrf.mxu0
  %v1804 = vadd.f32 0.0, %v1803
  %v1805 = vpop.f32.mrf.mxu0
  %v1806 = vadd.f32 0.0, %v1805
  %1807 = vmatmul.bf16.gmra.mxu0 %v1670
  %v1808 = vpop.f32.mrf.mxu0
  %v1809 = vadd.f32 0.0, %v1808
  %v1810 = vpop.f32.mrf.mxu0
  %v1811 = vadd.f32 0.0, %v1810
  %1812 = vmatmul.bf16.gmra.mxu0 %v1673
  %v1813 = vpop.f32.mrf.mxu0
  %v1814 = vadd.f32 0.0, %v1813
  %v1815 = vpop.f32.mrf.mxu0
  %v1816 = vadd.f32 0.0, %v1815
  %1817 = vmatmul.bf16.gmra.mxu0 %v1676
  %v1818 = vpop.f32.mrf.mxu0
  %v1819 = vadd.f32 0.0, %v1818
  %v1820 = vpop.f32.mrf.mxu0
  %v1821 = vadd.f32 0.0, %v1820
  %1822 = vmatmul.bf16.gmra.mxu0 %v1679
  %v1823 = vpop.f32.mrf.mxu0
  %v1824 = vadd.f32 0.0, %v1823
  %v1825 = vpop.f32.mrf.mxu0
  %v1826 = vadd.f32 0.0, %v1825
  %1827 = vmatmul.bf16.gmra.mxu0 %v1682
  %v1828 = vpop.f32.mrf.mxu0
  %v1829 = vadd.f32 0.0, %v1828
  %v1830 = vpop.f32.mrf.mxu0
  %v1831 = vadd.f32 0.0, %v1830
  %1832 = vmatmul.bf16.gmra.mxu0 %v1685
  %v1833 = vpop.f32.mrf.mxu0
  %v1834 = vadd.f32 0.0, %v1833
  %v1835 = vpop.f32.mrf.mxu0
  %v1836 = vadd.f32 0.0, %v1835
  %1837 = vmatmul.bf16.gmra.mxu0 %v1688
  %v1838 = vpop.f32.mrf.mxu0
  %v1839 = vadd.f32 0.0, %v1838
  %v1840 = vpop.f32.mrf.mxu0
  %v1841 = vadd.f32 0.0, %v1840
  %1842 = vmatmul.bf16.gmra.mxu0 %v1691
  %v1843 = vpop.f32.mrf.mxu0
  %v1844 = vadd.f32 0.0, %v1843
  %v1845 = vpop.f32.mrf.mxu0
  %v1846 = vadd.f32 0.0, %v1845
  %1847 = vmatmul.bf16.gmra.mxu0 %v1694
  %v1848 = vpop.f32.mrf.mxu0
  %v1849 = vadd.f32 0.0, %v1848
  %v1850 = vpop.f32.mrf.mxu0
  %v1851 = vadd.f32 0.0, %v1850
  %1852 = vmatmul.bf16.gmra.mxu0 %v1697
  %v1853 = vpop.f32.mrf.mxu0
  %v1854 = vadd.f32 0.0, %v1853
  %v1855 = vpop.f32.mrf.mxu0
  %v1856 = vadd.f32 0.0, %v1855
  %1857 = vmatmul.bf16.gmra.mxu0 %v1700
  %v1858 = vpop.f32.mrf.mxu0
  %v1859 = vadd.f32 0.0, %v1858
  %v1860 = vpop.f32.mrf.mxu0
  %v1861 = vadd.f32 0.0, %v1860
  %1862 = vmatmul.bf16.gmra.mxu0 %v1703
  %v1863 = vpop.f32.mrf.mxu0
  %v1864 = vadd.f32 0.0, %v1863
  %v1865 = vpop.f32.mrf.mxu0
  %v1866 = vadd.f32 0.0, %v1865
  %1867 = vmatmul.bf16.gmra.mxu0 %v1706
  %v1868 = vpop.f32.mrf.mxu0
  %v1869 = vadd.f32 0.0, %v1868
  %v1870 = vpop.f32.mrf.mxu0
  %v1871 = vadd.f32 0.0, %v1870
  %1872 = vmatmul.bf16.gmra.mxu0 %v1709
  %v1873 = vpop.f32.mrf.mxu0
  %v1874 = vadd.f32 0.0, %v1873
  %v1875 = vpop.f32.mrf.mxu0
  %v1876 = vadd.f32 0.0, %v1875
  %1877 = vmatmul.bf16.gmra.mxu0 %v1712
  %v1878 = vpop.f32.mrf.mxu0
  %v1879 = vadd.f32 0.0, %v1878
  %v1880 = vpop.f32.mrf.mxu0
  %v1881 = vadd.f32 0.0, %v1880
  %1882 = vmatmul.bf16.gmra.mxu0 %v1715
  %v1883 = vpop.f32.mrf.mxu0
  %v1884 = vadd.f32 0.0, %v1883
  %v1885 = vpop.f32.mrf.mxu0
  %v1886 = vadd.f32 0.0, %v1885
  %1887 = vmatmul.bf16.gmra.mxu0 %v1718
  %v1888 = vpop.f32.mrf.mxu0
  %v1889 = vadd.f32 0.0, %v1888
  %v1890 = vpop.f32.mrf.mxu0
  %v1891 = vadd.f32 0.0, %v1890
  %1892 = vmatmul.bf16.gmra.mxu0 %v1721
  %v1893 = vpop.f32.mrf.mxu0
  %v1894 = vadd.f32 0.0, %v1893
  %v1895 = vpop.f32.mrf.mxu0
  %v1896 = vadd.f32 0.0, %v1895
  %1897 = vmatmul.bf16.gmra.mxu0 %v1724
  %v1898 = vpop.f32.mrf.mxu0
  %v1899 = vadd.f32 0.0, %v1898
  %v1900 = vpop.f32.mrf.mxu0
  %v1901 = vadd.f32 0.0, %v1900
  %1902 = vmatmul.bf16.gmra.mxu0 %v1727
  %v1903 = vpop.f32.mrf.mxu0
  %v1904 = vadd.f32 0.0, %v1903
  %v1905 = vpop.f32.mrf.mxu0
  %v1906 = vadd.f32 0.0, %v1905
  %1907 = vmatmul.bf16.gmra.mxu0 %v1730
  %v1908 = vpop.f32.mrf.mxu0
  %v1909 = vadd.f32 0.0, %v1908
  %v1910 = vpop.f32.mrf.mxu0
  %v1911 = vadd.f32 0.0, %v1910
  %1912 = vmatmul.bf16.gmra.mxu0 %v1733
  %v1913 = vpop.f32.mrf.mxu0
  %v1914 = vadd.f32 0.0, %v1913
  %v1915 = vpop.f32.mrf.mxu0
  %v1916 = vadd.f32 0.0, %v1915
  %1917 = vmatmul.bf16.gmra.mxu0 %v1736
  %v1918 = vpop.f32.mrf.mxu0
  %v1919 = vadd.f32 0.0, %v1918
  %v1920 = vpop.f32.mrf.mxu0
  %v1921 = vadd.f32 0.0, %v1920
  %1922 = vmatmul.bf16.gmra.mxu0 %v1739
  %v1923 = vpop.f32.mrf.mxu0
  %v1924 = vadd.f32 0.0, %v1923
  %v1925 = vpop.f32.mrf.mxu0
  %v1926 = vadd.f32 0.0, %v1925
  %1927 = vmatmul.bf16.gmra.mxu0 %v1742
  %v1928 = vpop.f32.mrf.mxu0
  %v1929 = vadd.f32 0.0, %v1928
  %v1930 = vpop.f32.mrf.mxu0
  %v1931 = vadd.f32 0.0, %v1930
  %1932 = vdwg.mxu0
  %v1933 = vadd.f32 %v1511, %v1754
  %v1934 = vadd.f32 %v1512, %v1756
  %v1935 = vadd.f32 %v1513, %v1759
  %v1936 = vadd.f32 %v1514, %v1761
  %v1937 = vadd.f32 %v1515, %v1764
  %v1938 = vadd.f32 %v1516, %v1766
  %v1939 = vadd.f32 %v1517, %v1769
  %v1940 = vadd.f32 %v1518, %v1771
  %v1941 = vadd.f32 %v1519, %v1774
  %v1942 = vadd.f32 %v1520, %v1776
  %v1943 = vadd.f32 %v1521, %v1779
  %v1944 = vadd.f32 %v1522, %v1781
  %v1945 = vadd.f32 %v1523, %v1784
  %v1946 = vadd.f32 %v1524, %v1786
  %v1947 = vadd.f32 %v1525, %v1789
  %v1948 = vadd.f32 %v1526, %v1791
  %v1949 = vadd.f32 %v1527, %v1794
  %v1950 = vadd.f32 %v1528, %v1796
  %v1951 = vadd.f32 %v1529, %v1799
  %v1952 = vadd.f32 %v1530, %v1801
  %v1953 = vadd.f32 %v1531, %v1804
  %v1954 = vadd.f32 %v1532, %v1806
  %v1955 = vadd.f32 %v1533, %v1809
  %v1956 = vadd.f32 %v1534, %v1811
  %v1957 = vadd.f32 %v1535, %v1814
  %v1958 = vadd.f32 %v1536, %v1816
  %v1959 = vadd.f32 %v1537, %v1819
  %v1960 = vadd.f32 %v1538, %v1821
  %v1961 = vadd.f32 %v1539, %v1824
  %v1962 = vadd.f32 %v1540, %v1826
  %v1963 = vadd.f32 %v1541, %v1829
  %v1964 = vadd.f32 %v1542, %v1831
  %v1965 = vadd.f32 %v1543, %v1834
  %v1966 = vadd.f32 %v1544, %v1836
  %v1967 = vadd.f32 %v1545, %v1839
  %v1968 = vadd.f32 %v1546, %v1841
  %v1969 = vadd.f32 %v1547, %v1844
  %v1970 = vadd.f32 %v1548, %v1846
  %v1971 = vadd.f32 %v1549, %v1849
  %v1972 = vadd.f32 %v1550, %v1851
  %v1973 = vadd.f32 %v1551, %v1854
  %v1974 = vadd.f32 %v1552, %v1856
  %v1975 = vadd.f32 %v1553, %v1859
  %v1976 = vadd.f32 %v1554, %v1861
  %v1977 = vadd.f32 %v1555, %v1864
  %v1978 = vadd.f32 %v1556, %v1866
  %v1979 = vadd.f32 %v1557, %v1869
  %v1980 = vadd.f32 %v1558, %v1871
  %v1981 = vadd.f32 %v1559, %v1874
  %v1982 = vadd.f32 %v1560, %v1876
  %v1983 = vadd.f32 %v1561, %v1879
  %v1984 = vadd.f32 %v1562, %v1881
  %v1985 = vadd.f32 %v1563, %v1884
  %v1986 = vadd.f32 %v1564, %v1886
  %v1987 = vadd.f32 %v1565, %v1889
  %v1988 = vadd.f32 %v1566, %v1891
  %v1989 = vadd.f32 %v1567, %v1894
  %v1990 = vadd.f32 %v1568, %v1896
  %v1991 = vadd.f32 %v1569, %v1899
  %v1992 = vadd.f32 %v1570, %v1901
  %v1993 = vadd.f32 %v1571, %v1904
  %v1994 = vadd.f32 %v1572, %v1906
  %v1995 = vadd.f32 %v1573, %v1909
  %v1996 = vadd.f32 %v1574, %v1911
  %v1997 = vadd.f32 %v1575, %v1914
  %v1998 = vadd.f32 %v1576, %v1916
  %v1999 = vadd.f32 %v1577, %v1919
  %v2000 = vadd.f32 %v1578, %v1921
  %v2001 = vadd.f32 %v1579, %v1924
  %v2002 = vadd.f32 %v1580, %v1926
  %v2003 = vadd.f32 %v1581, %v1929
  %v2004 = vadd.f32 %v1582, %v1931
  %v2005 = vpack.c.bf16 %v1156, %v1155
  %v2006 = vpack.c.bf16 %v1158, %v1157
  %v2007 = vpack.c.bf16 %v1160, %v1159
  %s2008 = scalar_lea.vmem %s1, 112
  %v2009 = vld [vmem:[%s2008] sm:$0xf]
  %v2010 = vld [vmem:[%s2008 + $0x4] sm:$0xf]
  %v2011 = vld [vmem:[%s2008 + $0x8] sm:$0xf]
  %v2012 = vld [vmem:[%s2008 + $0xc] sm:$0xf]
  %v2017 = vunpack.c.l.b16 %v2009
  %v2018 = vunpack.c.l.b16 %v2010
  %v2019 = vunpack.c.l.b16 %v2011
  %v2020 = vunpack.c.l.b16 %v2012
  %v2021 = vpack.c.b16 %v2018, %v2017
  %v2022 = vpack.c.b16 %v2020, %v2019
  %v2026 = vsel %vm186, %v2005, 0
  %v2029 = vsel %vm186, %v2006, 0
  %v2032 = vsel %vm186, %v2007, 0
  %2034 = vmatpush.bf16.msra.mxu0 0
  %2035 = vmatpush.bf16.msra.mxu0 0
  %2036 = vmatpush.bf16.msra.mxu0 0
  %2037 = vmatpush.bf16.msra.mxu0 0
  %2038 = vmatpush.bf16.msra.mxu0 0
  %2039 = vmatpush.bf16.msra.mxu0 0
  %2040 = vmatpush.bf16.msra.mxu0 %v2022
  %2041 = vmatpush.bf16.msra.mxu0 %v2021
  %2042 = vmatmul.bf16.gmra.mxu0 %v1224
  %v2043 = vpop.f32.mrf.mxu0
  %v2044 = vadd.f32 0.0, %v2043
  %v2045 = vpop.f32.mrf.mxu0
  %v2046 = vadd.f32 0.0, %v2045
  %2047 = vmatmul.bf16.gmra.mxu0 %v1227
  %v2048 = vpop.f32.mrf.mxu0
  %v2049 = vadd.f32 0.0, %v2048
  %v2050 = vpop.f32.mrf.mxu0
  %v2051 = vadd.f32 0.0, %v2050
  %2052 = vmatmul.bf16.gmra.mxu0 %v1230
  %v2053 = vpop.f32.mrf.mxu0
  %v2054 = vadd.f32 0.0, %v2053
  %v2055 = vpop.f32.mrf.mxu0
  %v2056 = vadd.f32 0.0, %v2055
  %2057 = vmatmul.bf16.gmra.mxu0 %v1233
  %v2058 = vpop.f32.mrf.mxu0
  %v2059 = vadd.f32 0.0, %v2058
  %v2060 = vpop.f32.mrf.mxu0
  %v2061 = vadd.f32 0.0, %v2060
  %2062 = vmatmul.bf16.gmra.mxu0 %v1236
  %v2063 = vpop.f32.mrf.mxu0
  %v2064 = vadd.f32 0.0, %v2063
  %v2065 = vpop.f32.mrf.mxu0
  %v2066 = vadd.f32 0.0, %v2065
  %2067 = vmatmul.bf16.gmra.mxu0 %v1239
  %v2068 = vpop.f32.mrf.mxu0
  %v2069 = vadd.f32 0.0, %v2068
  %v2070 = vpop.f32.mrf.mxu0
  %v2071 = vadd.f32 0.0, %v2070
  %2072 = vmatmul.bf16.gmra.mxu0 %v1242
  %v2073 = vpop.f32.mrf.mxu0
  %v2074 = vadd.f32 0.0, %v2073
  %v2075 = vpop.f32.mrf.mxu0
  %v2076 = vadd.f32 0.0, %v2075
  %2077 = vmatmul.bf16.gmra.mxu0 %v1245
  %v2078 = vpop.f32.mrf.mxu0
  %v2079 = vadd.f32 0.0, %v2078
  %v2080 = vpop.f32.mrf.mxu0
  %v2081 = vadd.f32 0.0, %v2080
  %2082 = vmatmul.bf16.gmra.mxu0 %v1248
  %v2083 = vpop.f32.mrf.mxu0
  %v2084 = vadd.f32 0.0, %v2083
  %v2085 = vpop.f32.mrf.mxu0
  %v2086 = vadd.f32 0.0, %v2085
  %2087 = vmatmul.bf16.gmra.mxu0 %v1251
  %v2088 = vpop.f32.mrf.mxu0
  %v2089 = vadd.f32 0.0, %v2088
  %v2090 = vpop.f32.mrf.mxu0
  %v2091 = vadd.f32 0.0, %v2090
  %2092 = vmatmul.bf16.gmra.mxu0 %v1254
  %v2093 = vpop.f32.mrf.mxu0
  %v2094 = vadd.f32 0.0, %v2093
  %v2095 = vpop.f32.mrf.mxu0
  %v2096 = vadd.f32 0.0, %v2095
  %2097 = vmatmul.bf16.gmra.mxu0 %v1257
  %v2098 = vpop.f32.mrf.mxu0
  %v2099 = vadd.f32 0.0, %v2098
  %v2100 = vpop.f32.mrf.mxu0
  %v2101 = vadd.f32 0.0, %v2100
  %2102 = vmatmul.bf16.gmra.mxu0 %v1260
  %v2103 = vpop.f32.mrf.mxu0
  %v2104 = vadd.f32 0.0, %v2103
  %v2105 = vpop.f32.mrf.mxu0
  %v2106 = vadd.f32 0.0, %v2105
  %2107 = vmatmul.bf16.gmra.mxu0 %v1263
  %v2108 = vpop.f32.mrf.mxu0
  %v2109 = vadd.f32 0.0, %v2108
  %v2110 = vpop.f32.mrf.mxu0
  %v2111 = vadd.f32 0.0, %v2110
  %2112 = vmatmul.bf16.gmra.mxu0 %v1266
  %v2113 = vpop.f32.mrf.mxu0
  %v2114 = vadd.f32 0.0, %v2113
  %v2115 = vpop.f32.mrf.mxu0
  %v2116 = vadd.f32 0.0, %v2115
  %2117 = vmatmul.bf16.gmra.mxu0 %v1269
  %v2118 = vpop.f32.mrf.mxu0
  %v2119 = vadd.f32 0.0, %v2118
  %v2120 = vpop.f32.mrf.mxu0
  %v2121 = vadd.f32 0.0, %v2120
  %2122 = vmatmul.bf16.gmra.mxu0 %v1272
  %v2123 = vpop.f32.mrf.mxu0
  %v2124 = vadd.f32 0.0, %v2123
  %v2125 = vpop.f32.mrf.mxu0
  %v2126 = vadd.f32 0.0, %v2125
  %2127 = vmatmul.bf16.gmra.mxu0 %v1275
  %v2128 = vpop.f32.mrf.mxu0
  %v2129 = vadd.f32 0.0, %v2128
  %v2130 = vpop.f32.mrf.mxu0
  %v2131 = vadd.f32 0.0, %v2130
  %2132 = vmatmul.bf16.gmra.mxu0 %v1278
  %v2133 = vpop.f32.mrf.mxu0
  %v2134 = vadd.f32 0.0, %v2133
  %v2135 = vpop.f32.mrf.mxu0
  %v2136 = vadd.f32 0.0, %v2135
  %2137 = vmatmul.bf16.gmra.mxu0 %v1281
  %v2138 = vpop.f32.mrf.mxu0
  %v2139 = vadd.f32 0.0, %v2138
  %v2140 = vpop.f32.mrf.mxu0
  %v2141 = vadd.f32 0.0, %v2140
  %2142 = vmatmul.bf16.gmra.mxu0 %v1284
  %v2143 = vpop.f32.mrf.mxu0
  %v2144 = vadd.f32 0.0, %v2143
  %v2145 = vpop.f32.mrf.mxu0
  %v2146 = vadd.f32 0.0, %v2145
  %2147 = vmatmul.bf16.gmra.mxu0 %v1287
  %v2148 = vpop.f32.mrf.mxu0
  %v2149 = vadd.f32 0.0, %v2148
  %v2150 = vpop.f32.mrf.mxu0
  %v2151 = vadd.f32 0.0, %v2150
  %2152 = vmatmul.bf16.gmra.mxu0 %v1290
  %v2153 = vpop.f32.mrf.mxu0
  %v2154 = vadd.f32 0.0, %v2153
  %v2155 = vpop.f32.mrf.mxu0
  %v2156 = vadd.f32 0.0, %v2155
  %2157 = vmatmul.bf16.gmra.mxu0 %v1293
  %v2158 = vpop.f32.mrf.mxu0
  %v2159 = vadd.f32 0.0, %v2158
  %v2160 = vpop.f32.mrf.mxu0
  %v2161 = vadd.f32 0.0, %v2160
  %2162 = vmatmul.bf16.gmra.mxu0 %v1296
  %v2163 = vpop.f32.mrf.mxu0
  %v2164 = vadd.f32 0.0, %v2163
  %v2165 = vpop.f32.mrf.mxu0
  %v2166 = vadd.f32 0.0, %v2165
  %2167 = vmatmul.bf16.gmra.mxu0 %v1299
  %v2168 = vpop.f32.mrf.mxu0
  %v2169 = vadd.f32 0.0, %v2168
  %v2170 = vpop.f32.mrf.mxu0
  %v2171 = vadd.f32 0.0, %v2170
  %2172 = vmatmul.bf16.gmra.mxu0 %v1302
  %v2173 = vpop.f32.mrf.mxu0
  %v2174 = vadd.f32 0.0, %v2173
  %v2175 = vpop.f32.mrf.mxu0
  %v2176 = vadd.f32 0.0, %v2175
  %2177 = vmatmul.bf16.gmra.mxu0 %v1305
  %v2178 = vpop.f32.mrf.mxu0
  %v2179 = vadd.f32 0.0, %v2178
  %v2180 = vpop.f32.mrf.mxu0
  %v2181 = vadd.f32 0.0, %v2180
  %2182 = vmatmul.bf16.gmra.mxu0 %v1308
  %v2183 = vpop.f32.mrf.mxu0
  %v2184 = vadd.f32 0.0, %v2183
  %v2185 = vpop.f32.mrf.mxu0
  %v2186 = vadd.f32 0.0, %v2185
  %2187 = vmatmul.bf16.gmra.mxu0 %v1311
  %v2188 = vpop.f32.mrf.mxu0
  %v2189 = vadd.f32 0.0, %v2188
  %v2190 = vpop.f32.mrf.mxu0
  %v2191 = vadd.f32 0.0, %v2190
  %2192 = vmatmul.bf16.gmra.mxu0 %v1314
  %v2193 = vpop.f32.mrf.mxu0
  %v2194 = vadd.f32 0.0, %v2193
  %v2195 = vpop.f32.mrf.mxu0
  %v2196 = vadd.f32 0.0, %v2195
  %2197 = vmatmul.bf16.gmra.mxu0 %v1317
  %v2198 = vpop.f32.mrf.mxu0
  %v2199 = vadd.f32 0.0, %v2198
  %v2200 = vpop.f32.mrf.mxu0
  %v2201 = vadd.f32 0.0, %v2200
  %2202 = vmatmul.bf16.gmra.mxu0 %v1320
  %v2203 = vpop.f32.mrf.mxu0
  %v2204 = vadd.f32 0.0, %v2203
  %v2205 = vpop.f32.mrf.mxu0
  %v2206 = vadd.f32 0.0, %v2205
  %2207 = vmatmul.bf16.gmra.mxu0 %v2026
  %v2208 = vpop.f32.mrf.mxu0
  %v2209 = vadd.f32 0.0, %v2208
  %v2210 = vpop.f32.mrf.mxu0
  %v2211 = vadd.f32 0.0, %v2210
  %2212 = vmatmul.bf16.gmra.mxu0 %v2029
  %v2213 = vpop.f32.mrf.mxu0
  %v2214 = vadd.f32 0.0, %v2213
  %v2215 = vpop.f32.mrf.mxu0
  %v2216 = vadd.f32 0.0, %v2215
  %2217 = vmatmul.bf16.gmra.mxu0 %v2032
  %v2218 = vpop.f32.mrf.mxu0
  %v2219 = vadd.f32 0.0, %v2218
  %v2220 = vpop.f32.mrf.mxu0
  %v2221 = vadd.f32 0.0, %v2220
  %2222 = vdwg.mxu0
  %v2223 = vadd.f32 %v1933, %v2044
  %v2224 = vadd.f32 %v1934, %v2046
  %v2225 = vadd.f32 %v1935, %v2049
  %v2226 = vadd.f32 %v1936, %v2051
  %v2227 = vadd.f32 %v1937, %v2054
  %v2228 = vadd.f32 %v1938, %v2056
  %v2229 = vadd.f32 %v1939, %v2059
  %v2230 = vadd.f32 %v1940, %v2061
  %v2231 = vadd.f32 %v1941, %v2064
  %v2232 = vadd.f32 %v1942, %v2066
  %v2233 = vadd.f32 %v1943, %v2069
  %v2234 = vadd.f32 %v1944, %v2071
  %v2235 = vadd.f32 %v1945, %v2074
  %v2236 = vadd.f32 %v1946, %v2076
  %v2237 = vadd.f32 %v1947, %v2079
  %v2238 = vadd.f32 %v1948, %v2081
  %v2239 = vadd.f32 %v1949, %v2084
  %v2240 = vadd.f32 %v1950, %v2086
  %v2241 = vadd.f32 %v1951, %v2089
  %v2242 = vadd.f32 %v1952, %v2091
  %v2243 = vadd.f32 %v1953, %v2094
  %v2244 = vadd.f32 %v1954, %v2096
  %v2245 = vadd.f32 %v1955, %v2099
  %v2246 = vadd.f32 %v1956, %v2101
  %v2247 = vadd.f32 %v1957, %v2104
  %v2248 = vadd.f32 %v1958, %v2106
  %v2249 = vadd.f32 %v1959, %v2109
  %v2250 = vadd.f32 %v1960, %v2111
  %v2251 = vadd.f32 %v1961, %v2114
  %v2252 = vadd.f32 %v1962, %v2116
  %v2253 = vadd.f32 %v1963, %v2119
  %v2254 = vadd.f32 %v1964, %v2121
  %v2255 = vadd.f32 %v1965, %v2124
  %v2256 = vadd.f32 %v1966, %v2126
  %v2257 = vadd.f32 %v1967, %v2129
  %v2258 = vadd.f32 %v1968, %v2131
  %v2259 = vadd.f32 %v1969, %v2134
  %v2260 = vadd.f32 %v1970, %v2136
  %v2261 = vadd.f32 %v1971, %v2139
  %v2262 = vadd.f32 %v1972, %v2141
  %v2263 = vadd.f32 %v1973, %v2144
  %v2264 = vadd.f32 %v1974, %v2146
  %v2265 = vadd.f32 %v1975, %v2149
  %v2266 = vadd.f32 %v1976, %v2151
  %v2267 = vadd.f32 %v1977, %v2154
  %v2268 = vadd.f32 %v1978, %v2156
  %v2269 = vadd.f32 %v1979, %v2159
  %v2270 = vadd.f32 %v1980, %v2161
  %v2271 = vadd.f32 %v1981, %v2164
  %v2272 = vadd.f32 %v1982, %v2166
  %v2273 = vadd.f32 %v1983, %v2169
  %v2274 = vadd.f32 %v1984, %v2171
  %v2275 = vadd.f32 %v1985, %v2174
  %v2276 = vadd.f32 %v1986, %v2176
  %v2277 = vadd.f32 %v1987, %v2179
  %v2278 = vadd.f32 %v1988, %v2181
  %v2279 = vadd.f32 %v1989, %v2184
  %v2280 = vadd.f32 %v1990, %v2186
  %v2281 = vadd.f32 %v1991, %v2189
  %v2282 = vadd.f32 %v1992, %v2191
  %v2283 = vadd.f32 %v1993, %v2194
  %v2284 = vadd.f32 %v1994, %v2196
  %v2285 = vadd.f32 %v1995, %v2199
  %v2286 = vadd.f32 %v1996, %v2201
  %v2287 = vadd.f32 %v1997, %v2204
  %v2288 = vadd.f32 %v1998, %v2206
  %v2289 = vadd.f32 %v1999, %v2209
  %v2290 = vadd.f32 %v2000, %v2211
  %v2291 = vadd.f32 %v2001, %v2214
  %v2292 = vadd.f32 %v2002, %v2216
  %v2293 = vadd.f32 %v2003, %v2219
  %v2294 = vadd.f32 %v2004, %v2221
  %v2295 = vld [vmem:[%s0 + $0x2] sm:$0xff]
  %v2296 = vld [vmem:[%s0 + $0xa] sm:$0xff]
  %v2297 = vld [vmem:[%s0 + $0x12] sm:$0xff]
  %v2298 = vld [vmem:[%s0 + $0x22] sm:$0xff]
  %v2299 = vld [vmem:[%s0 + $0x2a] sm:$0xff]
  %v2300 = vld [vmem:[%s0 + $0x32] sm:$0xff]
  %v2301 = vld [vmem:[%s0 + $0x42] sm:$0xff]
  %v2302 = vld [vmem:[%s0 + $0x4a] sm:$0xff]
  %v2303 = vld [vmem:[%s0 + $0x52] sm:$0xff]
  %v2304 = vld [vmem:[%s0 + $0x62] sm:$0xff]
  %v2305 = vld [vmem:[%s0 + $0x6a] sm:$0xff]
  %v2306 = vld [vmem:[%s0 + $0x72] sm:$0xff]
  %v2307 = vld [vmem:[%s0 + $0x82] sm:$0xff]
  %v2308 = vld [vmem:[%s0 + $0x8a] sm:$0xff]
  %v2309 = vld [vmem:[%s0 + $0x92] sm:$0xff]
  %v2310 = vld [vmem:[%s0 + $0xa2] sm:$0xff]
  %v2311 = vld [vmem:[%s0 + $0xaa] sm:$0xff]
  %v2312 = vld [vmem:[%s0 + $0xb2] sm:$0xff]
  %v2313 = vld [vmem:[%s0 + $0xc2] sm:$0xff]
  %v2314 = vld [vmem:[%s0 + $0xca] sm:$0xff]
  %v2315 = vld [vmem:[%s0 + $0xd2] sm:$0xff]
  %v2316 = vld [vmem:[%s0 + $0xe2] sm:$0xff]
  %v2317 = vld [vmem:[%s0 + $0xea] sm:$0xff]
  %v2318 = vld [vmem:[%s0 + $0xf2] sm:$0xff]
  %v2319 = vld [vmem:[%s0 + $0x102] sm:$0xff]
  %v2320 = vld [vmem:[%s0 + $0x10a] sm:$0xff]
  %v2321 = vld [vmem:[%s0 + $0x112] sm:$0xff]
  %v2322 = vld [vmem:[%s0 + $0x122] sm:$0xff]
  %v2323 = vld [vmem:[%s0 + $0x12a] sm:$0xff]
  %v2324 = vld [vmem:[%s0 + $0x132] sm:$0xff]
  %v2325 = vld [vmem:[%s0 + $0x142] sm:$0xff]
  %v2326 = vld [vmem:[%s0 + $0x14a] sm:$0xff]
  %v2327 = vld [vmem:[%s0 + $0x152] sm:$0xff]
  %v2328 = vld [vmem:[%s0 + $0x162] sm:$0xff]
  %v2329 = vld [vmem:[%s0 + $0x16a] sm:$0xff]
  %v2330 = vld [vmem:[%s0 + $0x172] sm:$0xff]
  %v2331 = vld [vmem:[%s0 + $0x182] sm:$0xff]
  %v2332 = vld [vmem:[%s0 + $0x18a] sm:$0xff]
  %v2333 = vld [vmem:[%s0 + $0x192] sm:$0xff]
  %v2334 = vld [vmem:[%s0 + $0x1a2] sm:$0xff]
  %v2335 = vld [vmem:[%s0 + $0x1aa] sm:$0xff]
  %v2336 = vld [vmem:[%s0 + $0x1b2] sm:$0xff]
  %v2337 = vld [vmem:[%s0 + $0x1c2] sm:$0xff]
  %v2338 = vld [vmem:[%s0 + $0x1ca] sm:$0xff]
  %v2339 = vld [vmem:[%s0 + $0x1d2] sm:$0xff]
  %v2340 = vld [vmem:[%s0 + $0x1e2] sm:$0xff]
  %v2341 = vld [vmem:[%s0 + $0x1ea] sm:$0xff]
  %v2342 = vld [vmem:[%s0 + $0x1f2] sm:$0xff]
  %v2343 = vld [vmem:[%s0 + $0x202] sm:$0xff]
  %v2344 = vld [vmem:[%s0 + $0x20a] sm:$0xff]
  %v2345 = vld [vmem:[%s0 + $0x212] sm:$0xff]
  %v2346 = vld [vmem:[%s0 + $0x222] sm:$0xff]
  %v2347 = vld [vmem:[%s0 + $0x22a] sm:$0xff]
  %v2348 = vld [vmem:[%s0 + $0x232] sm:$0xff]
  %v2349 = vld [vmem:[%s0 + $0x242] sm:$0xff]
  %v2350 = vld [vmem:[%s0 + $0x24a] sm:$0xff]
  %v2351 = vld [vmem:[%s0 + $0x252] sm:$0xff]
  %v2352 = vld [vmem:[%s0 + $0x262] sm:$0xff]
  %v2353 = vld [vmem:[%s0 + $0x26a] sm:$0xff]
  %v2354 = vld [vmem:[%s0 + $0x272] sm:$0xff]
  %v2355 = vld [vmem:[%s0 + $0x282] sm:$0xff]
  %v2356 = vld [vmem:[%s0 + $0x28a] sm:$0xff]
  %v2357 = vld [vmem:[%s0 + $0x292] sm:$0xff]
  %v2358 = vld [vmem:[%s0 + $0x2a2] sm:$0xff]
  %v2359 = vld [vmem:[%s0 + $0x2aa] sm:$0xff]
  %v2360 = vld [vmem:[%s0 + $0x2b2] sm:$0xff]
  %v2361 = vld [vmem:[%s0 + $0x2c2] sm:$0xff]
  %v2362 = vld [vmem:[%s0 + $0x2ca] sm:$0xff]
  %v2363 = vld [vmem:[%s0 + $0x2d2] sm:$0xff]
  %v2364 = vld [vmem:[%s0 + $0x2e2] sm:$0xff]
  %v2365 = vld [vmem:[%s0 + $0x2ea] sm:$0xff]
  %v2366 = vld [vmem:[%s0 + $0x2f2] sm:$0xff]
  %v2367 = vld [vmem:[%s0 + $0x302] sm:$0xff]
  %v2368 = vld [vmem:[%s0 + $0x30a] sm:$0xff]
  %v2369 = vld [vmem:[%s0 + $0x312] sm:$0xff]
  %v2370 = vld [vmem:[%s0 + $0x322] sm:$0xff]
  %v2371 = vld [vmem:[%s0 + $0x32a] sm:$0xff]
  %v2372 = vld [vmem:[%s0 + $0x332] sm:$0xff]
  %v2373 = vpack.c.bf16 %v2296, %v2295
  %v2374 = vpack.c.bf16 %v2298, %v2297
  %v2375 = vpack.c.bf16 %v2300, %v2299
  %v2376 = vpack.c.bf16 %v2302, %v2301
  %v2377 = vpack.c.bf16 %v2304, %v2303
  %v2378 = vpack.c.bf16 %v2306, %v2305
  %v2379 = vpack.c.bf16 %v2308, %v2307
  %v2380 = vpack.c.bf16 %v2310, %v2309
  %v2381 = vpack.c.bf16 %v2312, %v2311
  %v2382 = vpack.c.bf16 %v2314, %v2313
  %v2383 = vpack.c.bf16 %v2316, %v2315
  %v2384 = vpack.c.bf16 %v2318, %v2317
  %v2385 = vpack.c.bf16 %v2320, %v2319
  %v2386 = vpack.c.bf16 %v2322, %v2321
  %v2387 = vpack.c.bf16 %v2324, %v2323
  %v2388 = vpack.c.bf16 %v2326, %v2325
  %v2389 = vpack.c.bf16 %v2328, %v2327
  %v2390 = vpack.c.bf16 %v2330, %v2329
  %v2391 = vpack.c.bf16 %v2332, %v2331
  %v2392 = vpack.c.bf16 %v2334, %v2333
  %v2393 = vpack.c.bf16 %v2336, %v2335
  %v2394 = vpack.c.bf16 %v2338, %v2337
  %v2395 = vpack.c.bf16 %v2340, %v2339
  %v2396 = vpack.c.bf16 %v2342, %v2341
  %v2397 = vpack.c.bf16 %v2344, %v2343
  %v2398 = vpack.c.bf16 %v2346, %v2345
  %v2399 = vpack.c.bf16 %v2348, %v2347
  %v2400 = vpack.c.bf16 %v2350, %v2349
  %v2401 = vpack.c.bf16 %v2352, %v2351
  %v2402 = vpack.c.bf16 %v2354, %v2353
  %v2403 = vpack.c.bf16 %v2356, %v2355
  %v2404 = vpack.c.bf16 %v2358, %v2357
  %v2405 = vpack.c.bf16 %v2360, %v2359
  %v2406 = vpack.c.bf16 %v2362, %v2361
  %v2407 = vpack.c.bf16 %v2364, %v2363
  %v2408 = vpack.c.bf16 %v2366, %v2365
  %s2409 = scalar_lea.vmem %s1, 32
  %v2410 = vld [vmem:[%s2409] sm:$0xf]
  %v2411 = vld [vmem:[%s2409 + $0x4] sm:$0xf]
  %v2412 = vld [vmem:[%s2409 + $0x8] sm:$0xf]
  %v2413 = vld [vmem:[%s2409 + $0xc] sm:$0xf]
  %v2418 = vunpack.c.l.b16 %v2410
  %v2419 = vunpack.c.l.b16 %v2411
  %v2420 = vunpack.c.l.b16 %v2412
  %v2421 = vunpack.c.l.b16 %v2413
  %v2422 = vpack.c.b16 %v2419, %v2418
  %v2423 = vpack.c.b16 %v2421, %v2420
  %v2427 = vsel %vm186, %v2373, 0
  %v2430 = vsel %vm186, %v2374, 0
  %v2433 = vsel %vm186, %v2375, 0
  %v2436 = vsel %vm186, %v2376, 0
  %v2439 = vsel %vm186, %v2377, 0
  %v2442 = vsel %vm186, %v2378, 0
  %v2445 = vsel %vm186, %v2379, 0
  %v2448 = vsel %vm186, %v2380, 0
  %v2451 = vsel %vm186, %v2381, 0
  %v2454 = vsel %vm186, %v2382, 0
  %v2457 = vsel %vm186, %v2383, 0
  %v2460 = vsel %vm186, %v2384, 0
  %v2463 = vsel %vm186, %v2385, 0
  %v2466 = vsel %vm186, %v2386, 0
  %v2469 = vsel %vm186, %v2387, 0
  %v2472 = vsel %vm186, %v2388, 0
  %v2475 = vsel %vm186, %v2389, 0
  %v2478 = vsel %vm186, %v2390, 0
  %v2481 = vsel %vm186, %v2391, 0
  %v2484 = vsel %vm186, %v2392, 0
  %v2487 = vsel %vm186, %v2393, 0
  %v2490 = vsel %vm186, %v2394, 0
  %v2493 = vsel %vm186, %v2395, 0
  %v2496 = vsel %vm186, %v2396, 0
  %v2499 = vsel %vm186, %v2397, 0
  %v2502 = vsel %vm186, %v2398, 0
  %v2505 = vsel %vm186, %v2399, 0
  %v2508 = vsel %vm186, %v2400, 0
  %v2511 = vsel %vm186, %v2401, 0
  %v2514 = vsel %vm186, %v2402, 0
  %v2517 = vsel %vm186, %v2403, 0
  %v2520 = vsel %vm186, %v2404, 0
  %v2523 = vsel %vm186, %v2405, 0
  %v2526 = vsel %vm186, %v2406, 0
  %v2529 = vsel %vm186, %v2407, 0
  %v2532 = vsel %vm186, %v2408, 0
  %2534 = vmatpush.bf16.msra.mxu0 0
  %2535 = vmatpush.bf16.msra.mxu0 0
  %2536 = vmatpush.bf16.msra.mxu0 0
  %2537 = vmatpush.bf16.msra.mxu0 0
  %2538 = vmatpush.bf16.msra.mxu0 0
  %2539 = vmatpush.bf16.msra.mxu0 0
  %2540 = vmatpush.bf16.msra.mxu0 %v2423
  %2541 = vmatpush.bf16.msra.mxu0 %v2422
  %2542 = vmatmul.bf16.gmra.mxu0 %v2427
  %v2543 = vpop.f32.mrf.mxu0
  %v2544 = vadd.f32 0.0, %v2543
  %v2545 = vpop.f32.mrf.mxu0
  %v2546 = vadd.f32 0.0, %v2545
  %2547 = vmatmul.bf16.gmra.mxu0 %v2430
  %v2548 = vpop.f32.mrf.mxu0
  %v2549 = vadd.f32 0.0, %v2548
  %v2550 = vpop.f32.mrf.mxu0
  %v2551 = vadd.f32 0.0, %v2550
  %2552 = vmatmul.bf16.gmra.mxu0 %v2433
  %v2553 = vpop.f32.mrf.mxu0
  %v2554 = vadd.f32 0.0, %v2553
  %v2555 = vpop.f32.mrf.mxu0
  %v2556 = vadd.f32 0.0, %v2555
  %2557 = vmatmul.bf16.gmra.mxu0 %v2436
  %v2558 = vpop.f32.mrf.mxu0
  %v2559 = vadd.f32 0.0, %v2558
  %v2560 = vpop.f32.mrf.mxu0
  %v2561 = vadd.f32 0.0, %v2560
  %2562 = vmatmul.bf16.gmra.mxu0 %v2439
  %v2563 = vpop.f32.mrf.mxu0
  %v2564 = vadd.f32 0.0, %v2563
  %v2565 = vpop.f32.mrf.mxu0
  %v2566 = vadd.f32 0.0, %v2565
  %2567 = vmatmul.bf16.gmra.mxu0 %v2442
  %v2568 = vpop.f32.mrf.mxu0
  %v2569 = vadd.f32 0.0, %v2568
  %v2570 = vpop.f32.mrf.mxu0
  %v2571 = vadd.f32 0.0, %v2570
  %2572 = vmatmul.bf16.gmra.mxu0 %v2445
  %v2573 = vpop.f32.mrf.mxu0
  %v2574 = vadd.f32 0.0, %v2573
  %v2575 = vpop.f32.mrf.mxu0
  %v2576 = vadd.f32 0.0, %v2575
  %2577 = vmatmul.bf16.gmra.mxu0 %v2448
  %v2578 = vpop.f32.mrf.mxu0
  %v2579 = vadd.f32 0.0, %v2578
  %v2580 = vpop.f32.mrf.mxu0
  %v2581 = vadd.f32 0.0, %v2580
  %2582 = vmatmul.bf16.gmra.mxu0 %v2451
  %v2583 = vpop.f32.mrf.mxu0
  %v2584 = vadd.f32 0.0, %v2583
  %v2585 = vpop.f32.mrf.mxu0
  %v2586 = vadd.f32 0.0, %v2585
  %2587 = vmatmul.bf16.gmra.mxu0 %v2454
  %v2588 = vpop.f32.mrf.mxu0
  %v2589 = vadd.f32 0.0, %v2588
  %v2590 = vpop.f32.mrf.mxu0
  %v2591 = vadd.f32 0.0, %v2590
  %2592 = vmatmul.bf16.gmra.mxu0 %v2457
  %v2593 = vpop.f32.mrf.mxu0
  %v2594 = vadd.f32 0.0, %v2593
  %v2595 = vpop.f32.mrf.mxu0
  %v2596 = vadd.f32 0.0, %v2595
  %2597 = vmatmul.bf16.gmra.mxu0 %v2460
  %v2598 = vpop.f32.mrf.mxu0
  %v2599 = vadd.f32 0.0, %v2598
  %v2600 = vpop.f32.mrf.mxu0
  %v2601 = vadd.f32 0.0, %v2600
  %2602 = vmatmul.bf16.gmra.mxu0 %v2463
  %v2603 = vpop.f32.mrf.mxu0
  %v2604 = vadd.f32 0.0, %v2603
  %v2605 = vpop.f32.mrf.mxu0
  %v2606 = vadd.f32 0.0, %v2605
  %2607 = vmatmul.bf16.gmra.mxu0 %v2466
  %v2608 = vpop.f32.mrf.mxu0
  %v2609 = vadd.f32 0.0, %v2608
  %v2610 = vpop.f32.mrf.mxu0
  %v2611 = vadd.f32 0.0, %v2610
  %2612 = vmatmul.bf16.gmra.mxu0 %v2469
  %v2613 = vpop.f32.mrf.mxu0
  %v2614 = vadd.f32 0.0, %v2613
  %v2615 = vpop.f32.mrf.mxu0
  %v2616 = vadd.f32 0.0, %v2615
  %2617 = vmatmul.bf16.gmra.mxu0 %v2472
  %v2618 = vpop.f32.mrf.mxu0
  %v2619 = vadd.f32 0.0, %v2618
  %v2620 = vpop.f32.mrf.mxu0
  %v2621 = vadd.f32 0.0, %v2620
  %2622 = vmatmul.bf16.gmra.mxu0 %v2475
  %v2623 = vpop.f32.mrf.mxu0
  %v2624 = vadd.f32 0.0, %v2623
  %v2625 = vpop.f32.mrf.mxu0
  %v2626 = vadd.f32 0.0, %v2625
  %2627 = vmatmul.bf16.gmra.mxu0 %v2478
  %v2628 = vpop.f32.mrf.mxu0
  %v2629 = vadd.f32 0.0, %v2628
  %v2630 = vpop.f32.mrf.mxu0
  %v2631 = vadd.f32 0.0, %v2630
  %2632 = vmatmul.bf16.gmra.mxu0 %v2481
  %v2633 = vpop.f32.mrf.mxu0
  %v2634 = vadd.f32 0.0, %v2633
  %v2635 = vpop.f32.mrf.mxu0
  %v2636 = vadd.f32 0.0, %v2635
  %2637 = vmatmul.bf16.gmra.mxu0 %v2484
  %v2638 = vpop.f32.mrf.mxu0
  %v2639 = vadd.f32 0.0, %v2638
  %v2640 = vpop.f32.mrf.mxu0
  %v2641 = vadd.f32 0.0, %v2640
  %2642 = vmatmul.bf16.gmra.mxu0 %v2487
  %v2643 = vpop.f32.mrf.mxu0
  %v2644 = vadd.f32 0.0, %v2643
  %v2645 = vpop.f32.mrf.mxu0
  %v2646 = vadd.f32 0.0, %v2645
  %2647 = vmatmul.bf16.gmra.mxu0 %v2490
  %v2648 = vpop.f32.mrf.mxu0
  %v2649 = vadd.f32 0.0, %v2648
  %v2650 = vpop.f32.mrf.mxu0
  %v2651 = vadd.f32 0.0, %v2650
  %2652 = vmatmul.bf16.gmra.mxu0 %v2493
  %v2653 = vpop.f32.mrf.mxu0
  %v2654 = vadd.f32 0.0, %v2653
  %v2655 = vpop.f32.mrf.mxu0
  %v2656 = vadd.f32 0.0, %v2655
  %2657 = vmatmul.bf16.gmra.mxu0 %v2496
  %v2658 = vpop.f32.mrf.mxu0
  %v2659 = vadd.f32 0.0, %v2658
  %v2660 = vpop.f32.mrf.mxu0
  %v2661 = vadd.f32 0.0, %v2660
  %2662 = vmatmul.bf16.gmra.mxu0 %v2499
  %v2663 = vpop.f32.mrf.mxu0
  %v2664 = vadd.f32 0.0, %v2663
  %v2665 = vpop.f32.mrf.mxu0
  %v2666 = vadd.f32 0.0, %v2665
  %2667 = vmatmul.bf16.gmra.mxu0 %v2502
  %v2668 = vpop.f32.mrf.mxu0
  %v2669 = vadd.f32 0.0, %v2668
  %v2670 = vpop.f32.mrf.mxu0
  %v2671 = vadd.f32 0.0, %v2670
  %2672 = vmatmul.bf16.gmra.mxu0 %v2505
  %v2673 = vpop.f32.mrf.mxu0
  %v2674 = vadd.f32 0.0, %v2673
  %v2675 = vpop.f32.mrf.mxu0
  %v2676 = vadd.f32 0.0, %v2675
  %2677 = vmatmul.bf16.gmra.mxu0 %v2508
  %v2678 = vpop.f32.mrf.mxu0
  %v2679 = vadd.f32 0.0, %v2678
  %v2680 = vpop.f32.mrf.mxu0
  %v2681 = vadd.f32 0.0, %v2680
  %2682 = vmatmul.bf16.gmra.mxu0 %v2511
  %v2683 = vpop.f32.mrf.mxu0
  %v2684 = vadd.f32 0.0, %v2683
  %v2685 = vpop.f32.mrf.mxu0
  %v2686 = vadd.f32 0.0, %v2685
  %2687 = vmatmul.bf16.gmra.mxu0 %v2514
  %v2688 = vpop.f32.mrf.mxu0
  %v2689 = vadd.f32 0.0, %v2688
  %v2690 = vpop.f32.mrf.mxu0
  %v2691 = vadd.f32 0.0, %v2690
  %2692 = vmatmul.bf16.gmra.mxu0 %v2517
  %v2693 = vpop.f32.mrf.mxu0
  %v2694 = vadd.f32 0.0, %v2693
  %v2695 = vpop.f32.mrf.mxu0
  %v2696 = vadd.f32 0.0, %v2695
  %2697 = vmatmul.bf16.gmra.mxu0 %v2520
  %v2698 = vpop.f32.mrf.mxu0
  %v2699 = vadd.f32 0.0, %v2698
  %v2700 = vpop.f32.mrf.mxu0
  %v2701 = vadd.f32 0.0, %v2700
  %2702 = vmatmul.bf16.gmra.mxu0 %v2523
  %v2703 = vpop.f32.mrf.mxu0
  %v2704 = vadd.f32 0.0, %v2703
  %v2705 = vpop.f32.mrf.mxu0
  %v2706 = vadd.f32 0.0, %v2705
  %2707 = vmatmul.bf16.gmra.mxu0 %v2526
  %v2708 = vpop.f32.mrf.mxu0
  %v2709 = vadd.f32 0.0, %v2708
  %v2710 = vpop.f32.mrf.mxu0
  %v2711 = vadd.f32 0.0, %v2710
  %2712 = vmatmul.bf16.gmra.mxu0 %v2529
  %v2713 = vpop.f32.mrf.mxu0
  %v2714 = vadd.f32 0.0, %v2713
  %v2715 = vpop.f32.mrf.mxu0
  %v2716 = vadd.f32 0.0, %v2715
  %2717 = vmatmul.bf16.gmra.mxu0 %v2532
  %v2718 = vpop.f32.mrf.mxu0
  %v2719 = vadd.f32 0.0, %v2718
  %v2720 = vpop.f32.mrf.mxu0
  %v2721 = vadd.f32 0.0, %v2720
  %2722 = vdwg.mxu0
  %v2723 = vadd.f32 %v2223, %v2544
  %v2724 = vadd.f32 %v2224, %v2546
  %v2725 = vadd.f32 %v2225, %v2549
  %v2726 = vadd.f32 %v2226, %v2551
  %v2727 = vadd.f32 %v2227, %v2554
  %v2728 = vadd.f32 %v2228, %v2556
  %v2729 = vadd.f32 %v2229, %v2559
  %v2730 = vadd.f32 %v2230, %v2561
  %v2731 = vadd.f32 %v2231, %v2564
  %v2732 = vadd.f32 %v2232, %v2566
  %v2733 = vadd.f32 %v2233, %v2569
  %v2734 = vadd.f32 %v2234, %v2571
  %v2735 = vadd.f32 %v2235, %v2574
  %v2736 = vadd.f32 %v2236, %v2576
  %v2737 = vadd.f32 %v2237, %v2579
  %v2738 = vadd.f32 %v2238, %v2581
  %v2739 = vadd.f32 %v2239, %v2584
  %v2740 = vadd.f32 %v2240, %v2586
  %v2741 = vadd.f32 %v2241, %v2589
  %v2742 = vadd.f32 %v2242, %v2591
  %v2743 = vadd.f32 %v2243, %v2594
  %v2744 = vadd.f32 %v2244, %v2596
  %v2745 = vadd.f32 %v2245, %v2599
  %v2746 = vadd.f32 %v2246, %v2601
  %v2747 = vadd.f32 %v2247, %v2604
  %v2748 = vadd.f32 %v2248, %v2606
  %v2749 = vadd.f32 %v2249, %v2609
  %v2750 = vadd.f32 %v2250, %v2611
  %v2751 = vadd.f32 %v2251, %v2614
  %v2752 = vadd.f32 %v2252, %v2616
  %v2753 = vadd.f32 %v2253, %v2619
  %v2754 = vadd.f32 %v2254, %v2621
  %v2755 = vadd.f32 %v2255, %v2624
  %v2756 = vadd.f32 %v2256, %v2626
  %v2757 = vadd.f32 %v2257, %v2629
  %v2758 = vadd.f32 %v2258, %v2631
  %v2759 = vadd.f32 %v2259, %v2634
  %v2760 = vadd.f32 %v2260, %v2636
  %v2761 = vadd.f32 %v2261, %v2639
  %v2762 = vadd.f32 %v2262, %v2641
  %v2763 = vadd.f32 %v2263, %v2644
  %v2764 = vadd.f32 %v2264, %v2646
  %v2765 = vadd.f32 %v2265, %v2649
  %v2766 = vadd.f32 %v2266, %v2651
  %v2767 = vadd.f32 %v2267, %v2654
  %v2768 = vadd.f32 %v2268, %v2656
  %v2769 = vadd.f32 %v2269, %v2659
  %v2770 = vadd.f32 %v2270, %v2661
  %v2771 = vadd.f32 %v2271, %v2664
  %v2772 = vadd.f32 %v2272, %v2666
  %v2773 = vadd.f32 %v2273, %v2669
  %v2774 = vadd.f32 %v2274, %v2671
  %v2775 = vadd.f32 %v2275, %v2674
  %v2776 = vadd.f32 %v2276, %v2676
  %v2777 = vadd.f32 %v2277, %v2679
  %v2778 = vadd.f32 %v2278, %v2681
  %v2779 = vadd.f32 %v2279, %v2684
  %v2780 = vadd.f32 %v2280, %v2686
  %v2781 = vadd.f32 %v2281, %v2689
  %v2782 = vadd.f32 %v2282, %v2691
  %v2783 = vadd.f32 %v2283, %v2694
  %v2784 = vadd.f32 %v2284, %v2696
  %v2785 = vadd.f32 %v2285, %v2699
  %v2786 = vadd.f32 %v2286, %v2701
  %v2787 = vadd.f32 %v2287, %v2704
  %v2788 = vadd.f32 %v2288, %v2706
  %v2789 = vadd.f32 %v2289, %v2709
  %v2790 = vadd.f32 %v2290, %v2711
  %v2791 = vadd.f32 %v2291, %v2714
  %v2792 = vadd.f32 %v2292, %v2716
  %v2793 = vadd.f32 %v2293, %v2719
  %v2794 = vadd.f32 %v2294, %v2721
  %v2795 = vpack.c.bf16 %v2299, %v2298
  %v2796 = vpack.c.bf16 %v2301, %v2300
  %v2797 = vpack.c.bf16 %v2303, %v2302
  %v2798 = vpack.c.bf16 %v2305, %v2304
  %v2799 = vpack.c.bf16 %v2307, %v2306
  %v2800 = vpack.c.bf16 %v2309, %v2308
  %v2801 = vpack.c.bf16 %v2311, %v2310
  %v2802 = vpack.c.bf16 %v2313, %v2312
  %v2803 = vpack.c.bf16 %v2315, %v2314
  %v2804 = vpack.c.bf16 %v2317, %v2316
  %v2805 = vpack.c.bf16 %v2319, %v2318
  %v2806 = vpack.c.bf16 %v2321, %v2320
  %v2807 = vpack.c.bf16 %v2323, %v2322
  %v2808 = vpack.c.bf16 %v2325, %v2324
  %v2809 = vpack.c.bf16 %v2327, %v2326
  %v2810 = vpack.c.bf16 %v2329, %v2328
  %v2811 = vpack.c.bf16 %v2331, %v2330
  %v2812 = vpack.c.bf16 %v2333, %v2332
  %v2813 = vpack.c.bf16 %v2335, %v2334
  %v2814 = vpack.c.bf16 %v2337, %v2336
  %v2815 = vpack.c.bf16 %v2339, %v2338
  %v2816 = vpack.c.bf16 %v2341, %v2340
  %v2817 = vpack.c.bf16 %v2343, %v2342
  %v2818 = vpack.c.bf16 %v2345, %v2344
  %v2819 = vpack.c.bf16 %v2347, %v2346
  %v2820 = vpack.c.bf16 %v2349, %v2348
  %v2821 = vpack.c.bf16 %v2351, %v2350
  %v2822 = vpack.c.bf16 %v2353, %v2352
  %v2823 = vpack.c.bf16 %v2355, %v2354
  %v2824 = vpack.c.bf16 %v2357, %v2356
  %v2825 = vpack.c.bf16 %v2359, %v2358
  %v2826 = vpack.c.bf16 %v2361, %v2360
  %v2827 = vpack.c.bf16 %v2363, %v2362
  %v2828 = vpack.c.bf16 %v2365, %v2364
  %v2829 = vpack.c.bf16 %v2367, %v2366
  %v2830 = vpack.c.bf16 %v2369, %v2368
  %s2831 = scalar_lea.vmem %s1, 80
  %v2832 = vld [vmem:[%s2831] sm:$0xf]
  %v2833 = vld [vmem:[%s2831 + $0x4] sm:$0xf]
  %v2834 = vld [vmem:[%s2831 + $0x8] sm:$0xf]
  %v2835 = vld [vmem:[%s2831 + $0xc] sm:$0xf]
  %v2840 = vunpack.c.l.b16 %v2832
  %v2841 = vunpack.c.l.b16 %v2833
  %v2842 = vunpack.c.l.b16 %v2834
  %v2843 = vunpack.c.l.b16 %v2835
  %v2844 = vpack.c.b16 %v2841, %v2840
  %v2845 = vpack.c.b16 %v2843, %v2842
  %v2849 = vsel %vm186, %v2795, 0
  %v2852 = vsel %vm186, %v2796, 0
  %v2855 = vsel %vm186, %v2797, 0
  %v2858 = vsel %vm186, %v2798, 0
  %v2861 = vsel %vm186, %v2799, 0
  %v2864 = vsel %vm186, %v2800, 0
  %v2867 = vsel %vm186, %v2801, 0
  %v2870 = vsel %vm186, %v2802, 0
  %v2873 = vsel %vm186, %v2803, 0
  %v2876 = vsel %vm186, %v2804, 0
  %v2879 = vsel %vm186, %v2805, 0
  %v2882 = vsel %vm186, %v2806, 0
  %v2885 = vsel %vm186, %v2807, 0
  %v2888 = vsel %vm186, %v2808, 0
  %v2891 = vsel %vm186, %v2809, 0
  %v2894 = vsel %vm186, %v2810, 0
  %v2897 = vsel %vm186, %v2811, 0
  %v2900 = vsel %vm186, %v2812, 0
  %v2903 = vsel %vm186, %v2813, 0
  %v2906 = vsel %vm186, %v2814, 0
  %v2909 = vsel %vm186, %v2815, 0
  %v2912 = vsel %vm186, %v2816, 0
  %v2915 = vsel %vm186, %v2817, 0
  %v2918 = vsel %vm186, %v2818, 0
  %v2921 = vsel %vm186, %v2819, 0
  %v2924 = vsel %vm186, %v2820, 0
  %v2927 = vsel %vm186, %v2821, 0
  %v2930 = vsel %vm186, %v2822, 0
  %v2933 = vsel %vm186, %v2823, 0
  %v2936 = vsel %vm186, %v2824, 0
  %v2939 = vsel %vm186, %v2825, 0
  %v2942 = vsel %vm186, %v2826, 0
  %v2945 = vsel %vm186, %v2827, 0
  %v2948 = vsel %vm186, %v2828, 0
  %v2951 = vsel %vm186, %v2829, 0
  %v2954 = vsel %vm186, %v2830, 0
  %2956 = vmatpush.bf16.msra.mxu0 0
  %2957 = vmatpush.bf16.msra.mxu0 0
  %2958 = vmatpush.bf16.msra.mxu0 0
  %2959 = vmatpush.bf16.msra.mxu0 0
  %2960 = vmatpush.bf16.msra.mxu0 0
  %2961 = vmatpush.bf16.msra.mxu0 0
  %2962 = vmatpush.bf16.msra.mxu0 %v2845
  %2963 = vmatpush.bf16.msra.mxu0 %v2844
  %2964 = vmatmul.bf16.gmra.mxu0 %v2849
  %v2965 = vpop.f32.mrf.mxu0
  %v2966 = vadd.f32 0.0, %v2965
  %v2967 = vpop.f32.mrf.mxu0
  %v2968 = vadd.f32 0.0, %v2967
  %2969 = vmatmul.bf16.gmra.mxu0 %v2852
  %v2970 = vpop.f32.mrf.mxu0
  %v2971 = vadd.f32 0.0, %v2970
  %v2972 = vpop.f32.mrf.mxu0
  %v2973 = vadd.f32 0.0, %v2972
  %2974 = vmatmul.bf16.gmra.mxu0 %v2855
  %v2975 = vpop.f32.mrf.mxu0
  %v2976 = vadd.f32 0.0, %v2975
  %v2977 = vpop.f32.mrf.mxu0
  %v2978 = vadd.f32 0.0, %v2977
  %2979 = vmatmul.bf16.gmra.mxu0 %v2858
  %v2980 = vpop.f32.mrf.mxu0
  %v2981 = vadd.f32 0.0, %v2980
  %v2982 = vpop.f32.mrf.mxu0
  %v2983 = vadd.f32 0.0, %v2982
  %2984 = vmatmul.bf16.gmra.mxu0 %v2861
  %v2985 = vpop.f32.mrf.mxu0
  %v2986 = vadd.f32 0.0, %v2985
  %v2987 = vpop.f32.mrf.mxu0
  %v2988 = vadd.f32 0.0, %v2987
  %2989 = vmatmul.bf16.gmra.mxu0 %v2864
  %v2990 = vpop.f32.mrf.mxu0
  %v2991 = vadd.f32 0.0, %v2990
  %v2992 = vpop.f32.mrf.mxu0
  %v2993 = vadd.f32 0.0, %v2992
  %2994 = vmatmul.bf16.gmra.mxu0 %v2867
  %v2995 = vpop.f32.mrf.mxu0
  %v2996 = vadd.f32 0.0, %v2995
  %v2997 = vpop.f32.mrf.mxu0
  %v2998 = vadd.f32 0.0, %v2997
  %2999 = vmatmul.bf16.gmra.mxu0 %v2870
  %v3000 = vpop.f32.mrf.mxu0
  %v3001 = vadd.f32 0.0, %v3000
  %v3002 = vpop.f32.mrf.mxu0
  %v3003 = vadd.f32 0.0, %v3002
  %3004 = vmatmul.bf16.gmra.mxu0 %v2873
  %v3005 = vpop.f32.mrf.mxu0
  %v3006 = vadd.f32 0.0, %v3005
  %v3007 = vpop.f32.mrf.mxu0
  %v3008 = vadd.f32 0.0, %v3007
  %3009 = vmatmul.bf16.gmra.mxu0 %v2876
  %v3010 = vpop.f32.mrf.mxu0
  %v3011 = vadd.f32 0.0, %v3010
  %v3012 = vpop.f32.mrf.mxu0
  %v3013 = vadd.f32 0.0, %v3012
  %3014 = vmatmul.bf16.gmra.mxu0 %v2879
  %v3015 = vpop.f32.mrf.mxu0
  %v3016 = vadd.f32 0.0, %v3015
  %v3017 = vpop.f32.mrf.mxu0
  %v3018 = vadd.f32 0.0, %v3017
  %3019 = vmatmul.bf16.gmra.mxu0 %v2882
  %v3020 = vpop.f32.mrf.mxu0
  %v3021 = vadd.f32 0.0, %v3020
  %v3022 = vpop.f32.mrf.mxu0
  %v3023 = vadd.f32 0.0, %v3022
  %3024 = vmatmul.bf16.gmra.mxu0 %v2885
  %v3025 = vpop.f32.mrf.mxu0
  %v3026 = vadd.f32 0.0, %v3025
  %v3027 = vpop.f32.mrf.mxu0
  %v3028 = vadd.f32 0.0, %v3027
  %3029 = vmatmul.bf16.gmra.mxu0 %v2888
  %v3030 = vpop.f32.mrf.mxu0
  %v3031 = vadd.f32 0.0, %v3030
  %v3032 = vpop.f32.mrf.mxu0
  %v3033 = vadd.f32 0.0, %v3032
  %3034 = vmatmul.bf16.gmra.mxu0 %v2891
  %v3035 = vpop.f32.mrf.mxu0
  %v3036 = vadd.f32 0.0, %v3035
  %v3037 = vpop.f32.mrf.mxu0
  %v3038 = vadd.f32 0.0, %v3037
  %3039 = vmatmul.bf16.gmra.mxu0 %v2894
  %v3040 = vpop.f32.mrf.mxu0
  %v3041 = vadd.f32 0.0, %v3040
  %v3042 = vpop.f32.mrf.mxu0
  %v3043 = vadd.f32 0.0, %v3042
  %3044 = vmatmul.bf16.gmra.mxu0 %v2897
  %v3045 = vpop.f32.mrf.mxu0
  %v3046 = vadd.f32 0.0, %v3045
  %v3047 = vpop.f32.mrf.mxu0
  %v3048 = vadd.f32 0.0, %v3047
  %3049 = vmatmul.bf16.gmra.mxu0 %v2900
  %v3050 = vpop.f32.mrf.mxu0
  %v3051 = vadd.f32 0.0, %v3050
  %v3052 = vpop.f32.mrf.mxu0
  %v3053 = vadd.f32 0.0, %v3052
  %3054 = vmatmul.bf16.gmra.mxu0 %v2903
  %v3055 = vpop.f32.mrf.mxu0
  %v3056 = vadd.f32 0.0, %v3055
  %v3057 = vpop.f32.mrf.mxu0
  %v3058 = vadd.f32 0.0, %v3057
  %3059 = vmatmul.bf16.gmra.mxu0 %v2906
  %v3060 = vpop.f32.mrf.mxu0
  %v3061 = vadd.f32 0.0, %v3060
  %v3062 = vpop.f32.mrf.mxu0
  %v3063 = vadd.f32 0.0, %v3062
  %3064 = vmatmul.bf16.gmra.mxu0 %v2909
  %v3065 = vpop.f32.mrf.mxu0
  %v3066 = vadd.f32 0.0, %v3065
  %v3067 = vpop.f32.mrf.mxu0
  %v3068 = vadd.f32 0.0, %v3067
  %3069 = vmatmul.bf16.gmra.mxu0 %v2912
  %v3070 = vpop.f32.mrf.mxu0
  %v3071 = vadd.f32 0.0, %v3070
  %v3072 = vpop.f32.mrf.mxu0
  %v3073 = vadd.f32 0.0, %v3072
  %3074 = vmatmul.bf16.gmra.mxu0 %v2915
  %v3075 = vpop.f32.mrf.mxu0
  %v3076 = vadd.f32 0.0, %v3075
  %v3077 = vpop.f32.mrf.mxu0
  %v3078 = vadd.f32 0.0, %v3077
  %3079 = vmatmul.bf16.gmra.mxu0 %v2918
  %v3080 = vpop.f32.mrf.mxu0
  %v3081 = vadd.f32 0.0, %v3080
  %v3082 = vpop.f32.mrf.mxu0
  %v3083 = vadd.f32 0.0, %v3082
  %3084 = vmatmul.bf16.gmra.mxu0 %v2921
  %v3085 = vpop.f32.mrf.mxu0
  %v3086 = vadd.f32 0.0, %v3085
  %v3087 = vpop.f32.mrf.mxu0
  %v3088 = vadd.f32 0.0, %v3087
  %3089 = vmatmul.bf16.gmra.mxu0 %v2924
  %v3090 = vpop.f32.mrf.mxu0
  %v3091 = vadd.f32 0.0, %v3090
  %v3092 = vpop.f32.mrf.mxu0
  %v3093 = vadd.f32 0.0, %v3092
  %3094 = vmatmul.bf16.gmra.mxu0 %v2927
  %v3095 = vpop.f32.mrf.mxu0
  %v3096 = vadd.f32 0.0, %v3095
  %v3097 = vpop.f32.mrf.mxu0
  %v3098 = vadd.f32 0.0, %v3097
  %3099 = vmatmul.bf16.gmra.mxu0 %v2930
  %v3100 = vpop.f32.mrf.mxu0
  %v3101 = vadd.f32 0.0, %v3100
  %v3102 = vpop.f32.mrf.mxu0
  %v3103 = vadd.f32 0.0, %v3102
  %3104 = vmatmul.bf16.gmra.mxu0 %v2933
  %v3105 = vpop.f32.mrf.mxu0
  %v3106 = vadd.f32 0.0, %v3105
  %v3107 = vpop.f32.mrf.mxu0
  %v3108 = vadd.f32 0.0, %v3107
  %3109 = vmatmul.bf16.gmra.mxu0 %v2936
  %v3110 = vpop.f32.mrf.mxu0
  %v3111 = vadd.f32 0.0, %v3110
  %v3112 = vpop.f32.mrf.mxu0
  %v3113 = vadd.f32 0.0, %v3112
  %3114 = vmatmul.bf16.gmra.mxu0 %v2939
  %v3115 = vpop.f32.mrf.mxu0
  %v3116 = vadd.f32 0.0, %v3115
  %v3117 = vpop.f32.mrf.mxu0
  %v3118 = vadd.f32 0.0, %v3117
  %3119 = vmatmul.bf16.gmra.mxu0 %v2942
  %v3120 = vpop.f32.mrf.mxu0
  %v3121 = vadd.f32 0.0, %v3120
  %v3122 = vpop.f32.mrf.mxu0
  %v3123 = vadd.f32 0.0, %v3122
  %3124 = vmatmul.bf16.gmra.mxu0 %v2945
  %v3125 = vpop.f32.mrf.mxu0
  %v3126 = vadd.f32 0.0, %v3125
  %v3127 = vpop.f32.mrf.mxu0
  %v3128 = vadd.f32 0.0, %v3127
  %3129 = vmatmul.bf16.gmra.mxu0 %v2948
  %v3130 = vpop.f32.mrf.mxu0
  %v3131 = vadd.f32 0.0, %v3130
  %v3132 = vpop.f32.mrf.mxu0
  %v3133 = vadd.f32 0.0, %v3132
  %3134 = vmatmul.bf16.gmra.mxu0 %v2951
  %v3135 = vpop.f32.mrf.mxu0
  %v3136 = vadd.f32 0.0, %v3135
  %v3137 = vpop.f32.mrf.mxu0
  %v3138 = vadd.f32 0.0, %v3137
  %3139 = vmatmul.bf16.gmra.mxu0 %v2954
  %v3140 = vpop.f32.mrf.mxu0
  %v3141 = vadd.f32 0.0, %v3140
  %v3142 = vpop.f32.mrf.mxu0
  %v3143 = vadd.f32 0.0, %v3142
  %3144 = vdwg.mxu0
  %v3145 = vadd.f32 %v2723, %v2966
  %v3146 = vadd.f32 %v2724, %v2968
  %v3147 = vadd.f32 %v2725, %v2971
  %v3148 = vadd.f32 %v2726, %v2973
  %v3149 = vadd.f32 %v2727, %v2976
  %v3150 = vadd.f32 %v2728, %v2978
  %v3151 = vadd.f32 %v2729, %v2981
  %v3152 = vadd.f32 %v2730, %v2983
  %v3153 = vadd.f32 %v2731, %v2986
  %v3154 = vadd.f32 %v2732, %v2988
  %v3155 = vadd.f32 %v2733, %v2991
  %v3156 = vadd.f32 %v2734, %v2993
  %v3157 = vadd.f32 %v2735, %v2996
  %v3158 = vadd.f32 %v2736, %v2998
  %v3159 = vadd.f32 %v2737, %v3001
  %v3160 = vadd.f32 %v2738, %v3003
  %v3161 = vadd.f32 %v2739, %v3006
  %v3162 = vadd.f32 %v2740, %v3008
  %v3163 = vadd.f32 %v2741, %v3011
  %v3164 = vadd.f32 %v2742, %v3013
  %v3165 = vadd.f32 %v2743, %v3016
  %v3166 = vadd.f32 %v2744, %v3018
  %v3167 = vadd.f32 %v2745, %v3021
  %v3168 = vadd.f32 %v2746, %v3023
  %v3169 = vadd.f32 %v2747, %v3026
  %v3170 = vadd.f32 %v2748, %v3028
  %v3171 = vadd.f32 %v2749, %v3031
  %v3172 = vadd.f32 %v2750, %v3033
  %v3173 = vadd.f32 %v2751, %v3036
  %v3174 = vadd.f32 %v2752, %v3038
  %v3175 = vadd.f32 %v2753, %v3041
  %v3176 = vadd.f32 %v2754, %v3043
  %v3177 = vadd.f32 %v2755, %v3046
  %v3178 = vadd.f32 %v2756, %v3048
  %v3179 = vadd.f32 %v2757, %v3051
  %v3180 = vadd.f32 %v2758, %v3053
  %v3181 = vadd.f32 %v2759, %v3056
  %v3182 = vadd.f32 %v2760, %v3058
  %v3183 = vadd.f32 %v2761, %v3061
  %v3184 = vadd.f32 %v2762, %v3063
  %v3185 = vadd.f32 %v2763, %v3066
  %v3186 = vadd.f32 %v2764, %v3068
  %v3187 = vadd.f32 %v2765, %v3071
  %v3188 = vadd.f32 %v2766, %v3073
  %v3189 = vadd.f32 %v2767, %v3076
  %v3190 = vadd.f32 %v2768, %v3078
  %v3191 = vadd.f32 %v2769, %v3081
  %v3192 = vadd.f32 %v2770, %v3083
  %v3193 = vadd.f32 %v2771, %v3086
  %v3194 = vadd.f32 %v2772, %v3088
  %v3195 = vadd.f32 %v2773, %v3091
  %v3196 = vadd.f32 %v2774, %v3093
  %v3197 = vadd.f32 %v2775, %v3096
  %v3198 = vadd.f32 %v2776, %v3098
  %v3199 = vadd.f32 %v2777, %v3101
  %v3200 = vadd.f32 %v2778, %v3103
  %v3201 = vadd.f32 %v2779, %v3106
  %v3202 = vadd.f32 %v2780, %v3108
  %v3203 = vadd.f32 %v2781, %v3111
  %v3204 = vadd.f32 %v2782, %v3113
  %v3205 = vadd.f32 %v2783, %v3116
  %v3206 = vadd.f32 %v2784, %v3118
  %v3207 = vadd.f32 %v2785, %v3121
  %v3208 = vadd.f32 %v2786, %v3123
  %v3209 = vadd.f32 %v2787, %v3126
  %v3210 = vadd.f32 %v2788, %v3128
  %v3211 = vadd.f32 %v2789, %v3131
  %v3212 = vadd.f32 %v2790, %v3133
  %v3213 = vadd.f32 %v2791, %v3136
  %v3214 = vadd.f32 %v2792, %v3138
  %v3215 = vadd.f32 %v2793, %v3141
  %v3216 = vadd.f32 %v2794, %v3143
  %v3217 = vpack.c.bf16 %v2368, %v2367
  %v3218 = vpack.c.bf16 %v2370, %v2369
  %v3219 = vpack.c.bf16 %v2372, %v2371
  %s3220 = scalar_lea.vmem %s1, 128
  %v3221 = vld [vmem:[%s3220] sm:$0xf]
  %v3222 = vld [vmem:[%s3220 + $0x4] sm:$0xf]
  %v3223 = vld [vmem:[%s3220 + $0x8] sm:$0xf]
  %v3224 = vld [vmem:[%s3220 + $0xc] sm:$0xf]
  %v3229 = vunpack.c.l.b16 %v3221
  %v3230 = vunpack.c.l.b16 %v3222
  %v3231 = vunpack.c.l.b16 %v3223
  %v3232 = vunpack.c.l.b16 %v3224
  %v3233 = vpack.c.b16 %v3230, %v3229
  %v3234 = vpack.c.b16 %v3232, %v3231
  %v3238 = vsel %vm186, %v3217, 0
  %v3241 = vsel %vm186, %v3218, 0
  %v3244 = vsel %vm186, %v3219, 0
  %3246 = vmatpush.bf16.msra.mxu0 0
  %3247 = vmatpush.bf16.msra.mxu0 0
  %3248 = vmatpush.bf16.msra.mxu0 0
  %3249 = vmatpush.bf16.msra.mxu0 0
  %3250 = vmatpush.bf16.msra.mxu0 0
  %3251 = vmatpush.bf16.msra.mxu0 0
  %3252 = vmatpush.bf16.msra.mxu0 %v3234
  %3253 = vmatpush.bf16.msra.mxu0 %v3233
  %3254 = vmatmul.bf16.gmra.mxu0 %v2436
  %v3255 = vpop.f32.mrf.mxu0
  %v3256 = vadd.f32 0.0, %v3255
  %v3257 = vpop.f32.mrf.mxu0
  %v3258 = vadd.f32 0.0, %v3257
  %3259 = vmatmul.bf16.gmra.mxu0 %v2439
  %v3260 = vpop.f32.mrf.mxu0
  %v3261 = vadd.f32 0.0, %v3260
  %v3262 = vpop.f32.mrf.mxu0
  %v3263 = vadd.f32 0.0, %v3262
  %3264 = vmatmul.bf16.gmra.mxu0 %v2442
  %v3265 = vpop.f32.mrf.mxu0
  %v3266 = vadd.f32 0.0, %v3265
  %v3267 = vpop.f32.mrf.mxu0
  %v3268 = vadd.f32 0.0, %v3267
  %3269 = vmatmul.bf16.gmra.mxu0 %v2445
  %v3270 = vpop.f32.mrf.mxu0
  %v3271 = vadd.f32 0.0, %v3270
  %v3272 = vpop.f32.mrf.mxu0
  %v3273 = vadd.f32 0.0, %v3272
  %3274 = vmatmul.bf16.gmra.mxu0 %v2448
  %v3275 = vpop.f32.mrf.mxu0
  %v3276 = vadd.f32 0.0, %v3275
  %v3277 = vpop.f32.mrf.mxu0
  %v3278 = vadd.f32 0.0, %v3277
  %3279 = vmatmul.bf16.gmra.mxu0 %v2451
  %v3280 = vpop.f32.mrf.mxu0
  %v3281 = vadd.f32 0.0, %v3280
  %v3282 = vpop.f32.mrf.mxu0
  %v3283 = vadd.f32 0.0, %v3282
  %3284 = vmatmul.bf16.gmra.mxu0 %v2454
  %v3285 = vpop.f32.mrf.mxu0
  %v3286 = vadd.f32 0.0, %v3285
  %v3287 = vpop.f32.mrf.mxu0
  %v3288 = vadd.f32 0.0, %v3287
  %3289 = vmatmul.bf16.gmra.mxu0 %v2457
  %v3290 = vpop.f32.mrf.mxu0
  %v3291 = vadd.f32 0.0, %v3290
  %v3292 = vpop.f32.mrf.mxu0
  %v3293 = vadd.f32 0.0, %v3292
  %3294 = vmatmul.bf16.gmra.mxu0 %v2460
  %v3295 = vpop.f32.mrf.mxu0
  %v3296 = vadd.f32 0.0, %v3295
  %v3297 = vpop.f32.mrf.mxu0
  %v3298 = vadd.f32 0.0, %v3297
  %3299 = vmatmul.bf16.gmra.mxu0 %v2463
  %v3300 = vpop.f32.mrf.mxu0
  %v3301 = vadd.f32 0.0, %v3300
  %v3302 = vpop.f32.mrf.mxu0
  %v3303 = vadd.f32 0.0, %v3302
  %3304 = vmatmul.bf16.gmra.mxu0 %v2466
  %v3305 = vpop.f32.mrf.mxu0
  %v3306 = vadd.f32 0.0, %v3305
  %v3307 = vpop.f32.mrf.mxu0
  %v3308 = vadd.f32 0.0, %v3307
  %3309 = vmatmul.bf16.gmra.mxu0 %v2469
  %v3310 = vpop.f32.mrf.mxu0
  %v3311 = vadd.f32 0.0, %v3310
  %v3312 = vpop.f32.mrf.mxu0
  %v3313 = vadd.f32 0.0, %v3312
  %3314 = vmatmul.bf16.gmra.mxu0 %v2472
  %v3315 = vpop.f32.mrf.mxu0
  %v3316 = vadd.f32 0.0, %v3315
  %v3317 = vpop.f32.mrf.mxu0
  %v3318 = vadd.f32 0.0, %v3317
  %3319 = vmatmul.bf16.gmra.mxu0 %v2475
  %v3320 = vpop.f32.mrf.mxu0
  %v3321 = vadd.f32 0.0, %v3320
  %v3322 = vpop.f32.mrf.mxu0
  %v3323 = vadd.f32 0.0, %v3322
  %3324 = vmatmul.bf16.gmra.mxu0 %v2478
  %v3325 = vpop.f32.mrf.mxu0
  %v3326 = vadd.f32 0.0, %v3325
  %v3327 = vpop.f32.mrf.mxu0
  %v3328 = vadd.f32 0.0, %v3327
  %3329 = vmatmul.bf16.gmra.mxu0 %v2481
  %v3330 = vpop.f32.mrf.mxu0
  %v3331 = vadd.f32 0.0, %v3330
  %v3332 = vpop.f32.mrf.mxu0
  %v3333 = vadd.f32 0.0, %v3332
  %3334 = vmatmul.bf16.gmra.mxu0 %v2484
  %v3335 = vpop.f32.mrf.mxu0
  %v3336 = vadd.f32 0.0, %v3335
  %v3337 = vpop.f32.mrf.mxu0
  %v3338 = vadd.f32 0.0, %v3337
  %3339 = vmatmul.bf16.gmra.mxu0 %v2487
  %v3340 = vpop.f32.mrf.mxu0
  %v3341 = vadd.f32 0.0, %v3340
  %v3342 = vpop.f32.mrf.mxu0
  %v3343 = vadd.f32 0.0, %v3342
  %3344 = vmatmul.bf16.gmra.mxu0 %v2490
  %v3345 = vpop.f32.mrf.mxu0
  %v3346 = vadd.f32 0.0, %v3345
  %v3347 = vpop.f32.mrf.mxu0
  %v3348 = vadd.f32 0.0, %v3347
  %3349 = vmatmul.bf16.gmra.mxu0 %v2493
  %v3350 = vpop.f32.mrf.mxu0
  %v3351 = vadd.f32 0.0, %v3350
  %v3352 = vpop.f32.mrf.mxu0
  %v3353 = vadd.f32 0.0, %v3352
  %3354 = vmatmul.bf16.gmra.mxu0 %v2496
  %v3355 = vpop.f32.mrf.mxu0
  %v3356 = vadd.f32 0.0, %v3355
  %v3357 = vpop.f32.mrf.mxu0
  %v3358 = vadd.f32 0.0, %v3357
  %3359 = vmatmul.bf16.gmra.mxu0 %v2499
  %v3360 = vpop.f32.mrf.mxu0
  %v3361 = vadd.f32 0.0, %v3360
  %v3362 = vpop.f32.mrf.mxu0
  %v3363 = vadd.f32 0.0, %v3362
  %3364 = vmatmul.bf16.gmra.mxu0 %v2502
  %v3365 = vpop.f32.mrf.mxu0
  %v3366 = vadd.f32 0.0, %v3365
  %v3367 = vpop.f32.mrf.mxu0
  %v3368 = vadd.f32 0.0, %v3367
  %3369 = vmatmul.bf16.gmra.mxu0 %v2505
  %v3370 = vpop.f32.mrf.mxu0
  %v3371 = vadd.f32 0.0, %v3370
  %v3372 = vpop.f32.mrf.mxu0
  %v3373 = vadd.f32 0.0, %v3372
  %3374 = vmatmul.bf16.gmra.mxu0 %v2508
  %v3375 = vpop.f32.mrf.mxu0
  %v3376 = vadd.f32 0.0, %v3375
  %v3377 = vpop.f32.mrf.mxu0
  %v3378 = vadd.f32 0.0, %v3377
  %3379 = vmatmul.bf16.gmra.mxu0 %v2511
  %v3380 = vpop.f32.mrf.mxu0
  %v3381 = vadd.f32 0.0, %v3380
  %v3382 = vpop.f32.mrf.mxu0
  %v3383 = vadd.f32 0.0, %v3382
  %3384 = vmatmul.bf16.gmra.mxu0 %v2514
  %v3385 = vpop.f32.mrf.mxu0
  %v3386 = vadd.f32 0.0, %v3385
  %v3387 = vpop.f32.mrf.mxu0
  %v3388 = vadd.f32 0.0, %v3387
  %3389 = vmatmul.bf16.gmra.mxu0 %v2517
  %v3390 = vpop.f32.mrf.mxu0
  %v3391 = vadd.f32 0.0, %v3390
  %v3392 = vpop.f32.mrf.mxu0
  %v3393 = vadd.f32 0.0, %v3392
  %3394 = vmatmul.bf16.gmra.mxu0 %v2520
  %v3395 = vpop.f32.mrf.mxu0
  %v3396 = vadd.f32 0.0, %v3395
  %v3397 = vpop.f32.mrf.mxu0
  %v3398 = vadd.f32 0.0, %v3397
  %3399 = vmatmul.bf16.gmra.mxu0 %v2523
  %v3400 = vpop.f32.mrf.mxu0
  %v3401 = vadd.f32 0.0, %v3400
  %v3402 = vpop.f32.mrf.mxu0
  %v3403 = vadd.f32 0.0, %v3402
  %3404 = vmatmul.bf16.gmra.mxu0 %v2526
  %v3405 = vpop.f32.mrf.mxu0
  %v3406 = vadd.f32 0.0, %v3405
  %v3407 = vpop.f32.mrf.mxu0
  %v3408 = vadd.f32 0.0, %v3407
  %3409 = vmatmul.bf16.gmra.mxu0 %v2529
  %v3410 = vpop.f32.mrf.mxu0
  %v3411 = vadd.f32 0.0, %v3410
  %v3412 = vpop.f32.mrf.mxu0
  %v3413 = vadd.f32 0.0, %v3412
  %3414 = vmatmul.bf16.gmra.mxu0 %v2532
  %v3415 = vpop.f32.mrf.mxu0
  %v3416 = vadd.f32 0.0, %v3415
  %v3417 = vpop.f32.mrf.mxu0
  %v3418 = vadd.f32 0.0, %v3417
  %3419 = vmatmul.bf16.gmra.mxu0 %v3238
  %v3420 = vpop.f32.mrf.mxu0
  %v3421 = vadd.f32 0.0, %v3420
  %v3422 = vpop.f32.mrf.mxu0
  %v3423 = vadd.f32 0.0, %v3422
  %3424 = vmatmul.bf16.gmra.mxu0 %v3241
  %v3425 = vpop.f32.mrf.mxu0
  %v3426 = vadd.f32 0.0, %v3425
  %v3427 = vpop.f32.mrf.mxu0
  %v3428 = vadd.f32 0.0, %v3427
  %3429 = vmatmul.bf16.gmra.mxu0 %v3244
  %v3430 = vpop.f32.mrf.mxu0
  %v3431 = vadd.f32 0.0, %v3430
  %v3432 = vpop.f32.mrf.mxu0
  %v3433 = vadd.f32 0.0, %v3432
  %3434 = vdwg.mxu0
  %v3435 = vadd.f32 %v3145, %v3256
  %v3436 = vadd.f32 %v3146, %v3258
  %v3437 = vadd.f32 %v3147, %v3261
  %v3438 = vadd.f32 %v3148, %v3263
  %v3439 = vadd.f32 %v3149, %v3266
  %v3440 = vadd.f32 %v3150, %v3268
  %v3441 = vadd.f32 %v3151, %v3271
  %v3442 = vadd.f32 %v3152, %v3273
  %v3443 = vadd.f32 %v3153, %v3276
  %v3444 = vadd.f32 %v3154, %v3278
  %v3445 = vadd.f32 %v3155, %v3281
  %v3446 = vadd.f32 %v3156, %v3283
  %v3447 = vadd.f32 %v3157, %v3286
  %v3448 = vadd.f32 %v3158, %v3288
  %v3449 = vadd.f32 %v3159, %v3291
  %v3450 = vadd.f32 %v3160, %v3293
  %v3451 = vadd.f32 %v3161, %v3296
  %v3452 = vadd.f32 %v3162, %v3298
  %v3453 = vadd.f32 %v3163, %v3301
  %v3454 = vadd.f32 %v3164, %v3303
  %v3455 = vadd.f32 %v3165, %v3306
  %v3456 = vadd.f32 %v3166, %v3308
  %v3457 = vadd.f32 %v3167, %v3311
  %v3458 = vadd.f32 %v3168, %v3313
  %v3459 = vadd.f32 %v3169, %v3316
  %v3460 = vadd.f32 %v3170, %v3318
  %v3461 = vadd.f32 %v3171, %v3321
  %v3462 = vadd.f32 %v3172, %v3323
  %v3463 = vadd.f32 %v3173, %v3326
  %v3464 = vadd.f32 %v3174, %v3328
  %v3465 = vadd.f32 %v3175, %v3331
  %v3466 = vadd.f32 %v3176, %v3333
  %v3467 = vadd.f32 %v3177, %v3336
  %v3468 = vadd.f32 %v3178, %v3338
  %v3469 = vadd.f32 %v3179, %v3341
  %v3470 = vadd.f32 %v3180, %v3343
  %v3471 = vadd.f32 %v3181, %v3346
  %v3472 = vadd.f32 %v3182, %v3348
  %v3473 = vadd.f32 %v3183, %v3351
  %v3474 = vadd.f32 %v3184, %v3353
  %v3475 = vadd.f32 %v3185, %v3356
  %v3476 = vadd.f32 %v3186, %v3358
  %v3477 = vadd.f32 %v3187, %v3361
  %v3478 = vadd.f32 %v3188, %v3363
  %v3479 = vadd.f32 %v3189, %v3366
  %v3480 = vadd.f32 %v3190, %v3368
  %v3481 = vadd.f32 %v3191, %v3371
  %v3482 = vadd.f32 %v3192, %v3373
  %v3483 = vadd.f32 %v3193, %v3376
  %v3484 = vadd.f32 %v3194, %v3378
  %v3485 = vadd.f32 %v3195, %v3381
  %v3486 = vadd.f32 %v3196, %v3383
  %v3487 = vadd.f32 %v3197, %v3386
  %v3488 = vadd.f32 %v3198, %v3388
  %v3489 = vadd.f32 %v3199, %v3391
  %v3490 = vadd.f32 %v3200, %v3393
  %v3491 = vadd.f32 %v3201, %v3396
  %v3492 = vadd.f32 %v3202, %v3398
  %v3493 = vadd.f32 %v3203, %v3401
  %v3494 = vadd.f32 %v3204, %v3403
  %v3495 = vadd.f32 %v3205, %v3406
  %v3496 = vadd.f32 %v3206, %v3408
  %v3497 = vadd.f32 %v3207, %v3411
  %v3498 = vadd.f32 %v3208, %v3413
  %v3499 = vadd.f32 %v3209, %v3416
  %v3500 = vadd.f32 %v3210, %v3418
  %v3501 = vadd.f32 %v3211, %v3421
  %v3502 = vadd.f32 %v3212, %v3423
  %v3503 = vadd.f32 %v3213, %v3426
  %v3504 = vadd.f32 %v3214, %v3428
  %v3505 = vadd.f32 %v3215, %v3431
  %v3506 = vadd.f32 %v3216, %v3433
  %v3507 = vld [vmem:[%s2] sm:$0x1]
  %v3509 = vperm.slane %v3507, 0
  %v3511 = vadd.f32 %v3435, %v3509
  %v3512 = vadd.f32 %v3436, %v3509
  %v3513 = vadd.f32 %v3437, %v3509
  %v3514 = vadd.f32 %v3438, %v3509
  %v3515 = vadd.f32 %v3439, %v3509
  %v3516 = vadd.f32 %v3440, %v3509
  %v3517 = vadd.f32 %v3441, %v3509
  %v3518 = vadd.f32 %v3442, %v3509
  %v3519 = vadd.f32 %v3443, %v3509
  %v3520 = vadd.f32 %v3444, %v3509
  %v3521 = vadd.f32 %v3445, %v3509
  %v3522 = vadd.f32 %v3446, %v3509
  %v3523 = vadd.f32 %v3447, %v3509
  %v3524 = vadd.f32 %v3448, %v3509
  %v3525 = vadd.f32 %v3449, %v3509
  %v3526 = vadd.f32 %v3450, %v3509
  %v3527 = vadd.f32 %v3451, %v3509
  %v3528 = vadd.f32 %v3452, %v3509
  %v3529 = vadd.f32 %v3453, %v3509
  %v3530 = vadd.f32 %v3454, %v3509
  %v3531 = vadd.f32 %v3455, %v3509
  %v3532 = vadd.f32 %v3456, %v3509
  %v3533 = vadd.f32 %v3457, %v3509
  %v3534 = vadd.f32 %v3458, %v3509
  %v3535 = vadd.f32 %v3459, %v3509
  %v3536 = vadd.f32 %v3460, %v3509
  %v3537 = vadd.f32 %v3461, %v3509
  %v3538 = vadd.f32 %v3462, %v3509
  %v3539 = vadd.f32 %v3463, %v3509
  %v3540 = vadd.f32 %v3464, %v3509
  %v3541 = vadd.f32 %v3465, %v3509
  %v3542 = vadd.f32 %v3466, %v3509
  %v3543 = vadd.f32 %v3467, %v3509
  %v3544 = vadd.f32 %v3468, %v3509
  %v3545 = vadd.f32 %v3469, %v3509
  %v3546 = vadd.f32 %v3470, %v3509
  %v3547 = vadd.f32 %v3471, %v3509
  %v3548 = vadd.f32 %v3472, %v3509
  %v3549 = vadd.f32 %v3473, %v3509
  %v3550 = vadd.f32 %v3474, %v3509
  %v3551 = vadd.f32 %v3475, %v3509
  %v3552 = vadd.f32 %v3476, %v3509
  %v3553 = vadd.f32 %v3477, %v3509
  %v3554 = vadd.f32 %v3478, %v3509
  %v3555 = vadd.f32 %v3479, %v3509
  %v3556 = vadd.f32 %v3480, %v3509
  %v3557 = vadd.f32 %v3481, %v3509
  %v3558 = vadd.f32 %v3482, %v3509
  %v3559 = vadd.f32 %v3483, %v3509
  %v3560 = vadd.f32 %v3484, %v3509
  %v3561 = vadd.f32 %v3485, %v3509
  %v3562 = vadd.f32 %v3486, %v3509
  %v3563 = vadd.f32 %v3487, %v3509
  %v3564 = vadd.f32 %v3488, %v3509
  %v3565 = vadd.f32 %v3489, %v3509
  %v3566 = vadd.f32 %v3490, %v3509
  %v3567 = vadd.f32 %v3491, %v3509
  %v3568 = vadd.f32 %v3492, %v3509
  %v3569 = vadd.f32 %v3493, %v3509
  %v3570 = vadd.f32 %v3494, %v3509
  %v3571 = vadd.f32 %v3495, %v3509
  %v3572 = vadd.f32 %v3496, %v3509
  %v3573 = vadd.f32 %v3497, %v3509
  %v3574 = vadd.f32 %v3498, %v3509
  %v3575 = vadd.f32 %v3499, %v3509
  %v3576 = vadd.f32 %v3500, %v3509
  %v3577 = vadd.f32 %v3501, %v3509
  %v3578 = vadd.f32 %v3502, %v3509
  %v3579 = vadd.f32 %v3503, %v3509
  %v3580 = vadd.f32 %v3504, %v3509
  %v3581 = vadd.f32 %v3505, %v3509
  %v3582 = vadd.f32 %v3506, %v3509
  %v3583 = vpack.c.bf16 %v3511, %v3511
  %v3584 = vpack.c.bf16 %v3512, %v3512
  %v3585 = vpack.c.bf16 %v3513, %v3513
  %v3586 = vpack.c.bf16 %v3514, %v3514
  %v3587 = vpack.c.bf16 %v3515, %v3515
  %v3588 = vpack.c.bf16 %v3516, %v3516
  %v3589 = vpack.c.bf16 %v3517, %v3517
  %v3590 = vpack.c.bf16 %v3518, %v3518
  %v3591 = vpack.c.bf16 %v3519, %v3519
  %v3592 = vpack.c.bf16 %v3520, %v3520
  %v3593 = vpack.c.bf16 %v3521, %v3521
  %v3594 = vpack.c.bf16 %v3522, %v3522
  %v3595 = vpack.c.bf16 %v3523, %v3523
  %v3596 = vpack.c.bf16 %v3524, %v3524
  %v3597 = vpack.c.bf16 %v3525, %v3525
  %v3598 = vpack.c.bf16 %v3526, %v3526
  %v3599 = vpack.c.bf16 %v3527, %v3527
  %v3600 = vpack.c.bf16 %v3528, %v3528
  %v3601 = vpack.c.bf16 %v3529, %v3529
  %v3602 = vpack.c.bf16 %v3530, %v3530
  %v3603 = vpack.c.bf16 %v3531, %v3531
  %v3604 = vpack.c.bf16 %v3532, %v3532
  %v3605 = vpack.c.bf16 %v3533, %v3533
  %v3606 = vpack.c.bf16 %v3534, %v3534
  %v3607 = vpack.c.bf16 %v3535, %v3535
  %v3608 = vpack.c.bf16 %v3536, %v3536
  %v3609 = vpack.c.bf16 %v3537, %v3537
  %v3610 = vpack.c.bf16 %v3538, %v3538
  %v3611 = vpack.c.bf16 %v3539, %v3539
  %v3612 = vpack.c.bf16 %v3540, %v3540
  %v3613 = vpack.c.bf16 %v3541, %v3541
  %v3614 = vpack.c.bf16 %v3542, %v3542
  %v3615 = vpack.c.bf16 %v3543, %v3543
  %v3616 = vpack.c.bf16 %v3544, %v3544
  %v3617 = vpack.c.bf16 %v3545, %v3545
  %v3618 = vpack.c.bf16 %v3546, %v3546
  %v3619 = vpack.c.bf16 %v3547, %v3547
  %v3620 = vpack.c.bf16 %v3548, %v3548
  %v3621 = vpack.c.bf16 %v3549, %v3549
  %v3622 = vpack.c.bf16 %v3550, %v3550
  %v3623 = vpack.c.bf16 %v3551, %v3551
  %v3624 = vpack.c.bf16 %v3552, %v3552
  %v3625 = vpack.c.bf16 %v3553, %v3553
  %v3626 = vpack.c.bf16 %v3554, %v3554
  %v3627 = vpack.c.bf16 %v3555, %v3555
  %v3628 = vpack.c.bf16 %v3556, %v3556
  %v3629 = vpack.c.bf16 %v3557, %v3557
  %v3630 = vpack.c.bf16 %v3558, %v3558
  %v3631 = vpack.c.bf16 %v3559, %v3559
  %v3632 = vpack.c.bf16 %v3560, %v3560
  %v3633 = vpack.c.bf16 %v3561, %v3561
  %v3634 = vpack.c.bf16 %v3562, %v3562
  %v3635 = vpack.c.bf16 %v3563, %v3563
  %v3636 = vpack.c.bf16 %v3564, %v3564
  %v3637 = vpack.c.bf16 %v3565, %v3565
  %v3638 = vpack.c.bf16 %v3566, %v3566
  %v3639 = vpack.c.bf16 %v3567, %v3567
  %v3640 = vpack.c.bf16 %v3568, %v3568
  %v3641 = vpack.c.bf16 %v3569, %v3569
  %v3642 = vpack.c.bf16 %v3570, %v3570
  %v3643 = vpack.c.bf16 %v3571, %v3571
  %v3644 = vpack.c.bf16 %v3572, %v3572
  %v3645 = vpack.c.bf16 %v3573, %v3573
  %v3646 = vpack.c.bf16 %v3574, %v3574
  %v3647 = vpack.c.bf16 %v3575, %v3575
  %v3648 = vpack.c.bf16 %v3576, %v3576
  %v3649 = vpack.c.bf16 %v3577, %v3577
  %v3650 = vpack.c.bf16 %v3578, %v3578
  %v3651 = vpack.c.bf16 %v3579, %v3579
  %v3652 = vpack.c.bf16 %v3580, %v3580
  %v3653 = vpack.c.bf16 %v3581, %v3581
  %v3654 = vpack.c.bf16 %v3582, %v3582
  %vm3655 = vcmask 519168
  %3656 = vst.msk [vmem:[%s3] sm:$0xf] %vm3655, %v3583
  %3657 = vst.msk [vmem:[%s3 + $0x4] sm:$0xf] %vm3655, %v3584
  %3658 = vst.msk [vmem:[%s3 + $0x8] sm:$0xf] %vm3655, %v3585
  %3659 = vst.msk [vmem:[%s3 + $0xc] sm:$0xf] %vm3655, %v3586
  %3660 = vst.msk [vmem:[%s3 + $0x10] sm:$0xf] %vm3655, %v3587
  %3661 = vst.msk [vmem:[%s3 + $0x14] sm:$0xf] %vm3655, %v3588
  %3662 = vst.msk [vmem:[%s3 + $0x18] sm:$0xf] %vm3655, %v3589
  %3663 = vst.msk [vmem:[%s3 + $0x1c] sm:$0xf] %vm3655, %v3590
  %3664 = vst.msk [vmem:[%s3 + $0x20] sm:$0xf] %vm3655, %v3591
  %3665 = vst.msk [vmem:[%s3 + $0x24] sm:$0xf] %vm3655, %v3592
  %3666 = vst.msk [vmem:[%s3 + $0x28] sm:$0xf] %vm3655, %v3593
  %3667 = vst.msk [vmem:[%s3 + $0x2c] sm:$0xf] %vm3655, %v3594
  %3668 = vst.msk [vmem:[%s3 + $0x30] sm:$0xf] %vm3655, %v3595
  %3669 = vst.msk [vmem:[%s3 + $0x34] sm:$0xf] %vm3655, %v3596
  %3670 = vst.msk [vmem:[%s3 + $0x38] sm:$0xf] %vm3655, %v3597
  %3671 = vst.msk [vmem:[%s3 + $0x3c] sm:$0xf] %vm3655, %v3598
  %3672 = vst.msk [vmem:[%s3 + $0x40] sm:$0xf] %vm3655, %v3599
  %3673 = vst.msk [vmem:[%s3 + $0x44] sm:$0xf] %vm3655, %v3600
  %3674 = vst.msk [vmem:[%s3 + $0x48] sm:$0xf] %vm3655, %v3601
  %3675 = vst.msk [vmem:[%s3 + $0x4c] sm:$0xf] %vm3655, %v3602
  %3676 = vst.msk [vmem:[%s3 + $0x50] sm:$0xf] %vm3655, %v3603
  %3677 = vst.msk [vmem:[%s3 + $0x54] sm:$0xf] %vm3655, %v3604
  %3678 = vst.msk [vmem:[%s3 + $0x58] sm:$0xf] %vm3655, %v3605
  %3679 = vst.msk [vmem:[%s3 + $0x5c] sm:$0xf] %vm3655, %v3606
  %3680 = vst.msk [vmem:[%s3 + $0x60] sm:$0xf] %vm3655, %v3607
  %3681 = vst.msk [vmem:[%s3 + $0x64] sm:$0xf] %vm3655, %v3608
  %3682 = vst.msk [vmem:[%s3 + $0x68] sm:$0xf] %vm3655, %v3609
  %3683 = vst.msk [vmem:[%s3 + $0x6c] sm:$0xf] %vm3655, %v3610
  %3684 = vst.msk [vmem:[%s3 + $0x70] sm:$0xf] %vm3655, %v3611
  %3685 = vst.msk [vmem:[%s3 + $0x74] sm:$0xf] %vm3655, %v3612
  %3686 = vst.msk [vmem:[%s3 + $0x78] sm:$0xf] %vm3655, %v3613
  %3687 = vst.msk [vmem:[%s3 + $0x7c] sm:$0xf] %vm3655, %v3614
  %3688 = vst.msk [vmem:[%s3 + $0x80] sm:$0xf] %vm3655, %v3615
  %3689 = vst.msk [vmem:[%s3 + $0x84] sm:$0xf] %vm3655, %v3616
  %3690 = vst.msk [vmem:[%s3 + $0x88] sm:$0xf] %vm3655, %v3617
  %3691 = vst.msk [vmem:[%s3 + $0x8c] sm:$0xf] %vm3655, %v3618
  %3692 = vst.msk [vmem:[%s3 + $0x90] sm:$0xf] %vm3655, %v3619
  %3693 = vst.msk [vmem:[%s3 + $0x94] sm:$0xf] %vm3655, %v3620
  %3694 = vst.msk [vmem:[%s3 + $0x98] sm:$0xf] %vm3655, %v3621
  %3695 = vst.msk [vmem:[%s3 + $0x9c] sm:$0xf] %vm3655, %v3622
  %3696 = vst.msk [vmem:[%s3 + $0xa0] sm:$0xf] %vm3655, %v3623
  %3697 = vst.msk [vmem:[%s3 + $0xa4] sm:$0xf] %vm3655, %v3624
  %3698 = vst.msk [vmem:[%s3 + $0xa8] sm:$0xf] %vm3655, %v3625
  %3699 = vst.msk [vmem:[%s3 + $0xac] sm:$0xf] %vm3655, %v3626
  %3700 = vst.msk [vmem:[%s3 + $0xb0] sm:$0xf] %vm3655, %v3627
  %3701 = vst.msk [vmem:[%s3 + $0xb4] sm:$0xf] %vm3655, %v3628
  %3702 = vst.msk [vmem:[%s3 + $0xb8] sm:$0xf] %vm3655, %v3629
  %3703 = vst.msk [vmem:[%s3 + $0xbc] sm:$0xf] %vm3655, %v3630
  %3704 = vst.msk [vmem:[%s3 + $0xc0] sm:$0xf] %vm3655, %v3631
  %3705 = vst.msk [vmem:[%s3 + $0xc4] sm:$0xf] %vm3655, %v3632
  %3706 = vst.msk [vmem:[%s3 + $0xc8] sm:$0xf] %vm3655, %v3633
  %3707 = vst.msk [vmem:[%s3 + $0xcc] sm:$0xf] %vm3655, %v3634
  %3708 = vst.msk [vmem:[%s3 + $0xd0] sm:$0xf] %vm3655, %v3635
  %3709 = vst.msk [vmem:[%s3 + $0xd4] sm:$0xf] %vm3655, %v3636
  %3710 = vst.msk [vmem:[%s3 + $0xd8] sm:$0xf] %vm3655, %v3637
  %3711 = vst.msk [vmem:[%s3 + $0xdc] sm:$0xf] %vm3655, %v3638
  %3712 = vst.msk [vmem:[%s3 + $0xe0] sm:$0xf] %vm3655, %v3639
  %3713 = vst.msk [vmem:[%s3 + $0xe4] sm:$0xf] %vm3655, %v3640
  %3714 = vst.msk [vmem:[%s3 + $0xe8] sm:$0xf] %vm3655, %v3641
  %3715 = vst.msk [vmem:[%s3 + $0xec] sm:$0xf] %vm3655, %v3642
  %3716 = vst.msk [vmem:[%s3 + $0xf0] sm:$0xf] %vm3655, %v3643
  %3717 = vst.msk [vmem:[%s3 + $0xf4] sm:$0xf] %vm3655, %v3644
  %3718 = vst.msk [vmem:[%s3 + $0xf8] sm:$0xf] %vm3655, %v3645
  %3719 = vst.msk [vmem:[%s3 + $0xfc] sm:$0xf] %vm3655, %v3646
  %3720 = vst.msk [vmem:[%s3 + $0x100] sm:$0xf] %vm3655, %v3647
  %3721 = vst.msk [vmem:[%s3 + $0x104] sm:$0xf] %vm3655, %v3648
  %3722 = vst.msk [vmem:[%s3 + $0x108] sm:$0xf] %vm3655, %v3649
  %3723 = vst.msk [vmem:[%s3 + $0x10c] sm:$0xf] %vm3655, %v3650
  %3724 = vst.msk [vmem:[%s3 + $0x110] sm:$0xf] %vm3655, %v3651
  %3725 = vst.msk [vmem:[%s3 + $0x114] sm:$0xf] %vm3655, %v3652
  %3726 = vst.msk [vmem:[%s3 + $0x118] sm:$0xf] %vm3655, %v3653
  %3727 = vst.msk [vmem:[%s3 + $0x11c] sm:$0xf] %vm3655, %v3654
  %s3728 = scalar_lea.vmem %s0, 832
  %v3729 = vld [vmem:[%s3728] sm:$0xff]
  %v3730 = vld [vmem:[%s3728 + $0x8] sm:$0xff]
  %v3731 = vld [vmem:[%s3728 + $0x10] sm:$0xff]
  %v3732 = vld [vmem:[%s3728 + $0x20] sm:$0xff]
  %v3733 = vld [vmem:[%s3728 + $0x28] sm:$0xff]
  %v3734 = vld [vmem:[%s3728 + $0x30] sm:$0xff]
  %v3735 = vld [vmem:[%s3728 + $0x40] sm:$0xff]
  %v3736 = vld [vmem:[%s3728 + $0x48] sm:$0xff]
  %v3737 = vld [vmem:[%s3728 + $0x50] sm:$0xff]
  %v3738 = vld [vmem:[%s3728 + $0x60] sm:$0xff]
  %v3739 = vld [vmem:[%s3728 + $0x68] sm:$0xff]
  %v3740 = vld [vmem:[%s3728 + $0x70] sm:$0xff]
  %v3741 = vld [vmem:[%s3728 + $0x80] sm:$0xff]
  %v3742 = vld [vmem:[%s3728 + $0x88] sm:$0xff]
  %v3743 = vld [vmem:[%s3728 + $0x90] sm:$0xff]
  %v3744 = vld [vmem:[%s3728 + $0xa0] sm:$0xff]
  %v3745 = vld [vmem:[%s3728 + $0xa8] sm:$0xff]
  %v3746 = vld [vmem:[%s3728 + $0xb0] sm:$0xff]
  %v3747 = vld [vmem:[%s3728 + $0xc0] sm:$0xff]
  %v3748 = vld [vmem:[%s3728 + $0xc8] sm:$0xff]
  %v3749 = vld [vmem:[%s3728 + $0xd0] sm:$0xff]
  %v3750 = vld [vmem:[%s3728 + $0xe0] sm:$0xff]
  %v3751 = vld [vmem:[%s3728 + $0xe8] sm:$0xff]
  %v3752 = vld [vmem:[%s3728 + $0xf0] sm:$0xff]
  %v3753 = vld [vmem:[%s3728 + $0x100] sm:$0xff]
  %v3754 = vld [vmem:[%s3728 + $0x108] sm:$0xff]
  %v3755 = vld [vmem:[%s3728 + $0x110] sm:$0xff]
  %v3756 = vld [vmem:[%s3728 + $0x120] sm:$0xff]
  %v3757 = vld [vmem:[%s3728 + $0x128] sm:$0xff]
  %v3758 = vld [vmem:[%s3728 + $0x130] sm:$0xff]
  %v3759 = vld [vmem:[%s3728 + $0x140] sm:$0xff]
  %v3760 = vld [vmem:[%s3728 + $0x148] sm:$0xff]
  %v3761 = vld [vmem:[%s3728 + $0x150] sm:$0xff]
  %v3762 = vld [vmem:[%s3728 + $0x160] sm:$0xff]
  %v3763 = vld [vmem:[%s3728 + $0x168] sm:$0xff]
  %v3764 = vld [vmem:[%s3728 + $0x170] sm:$0xff]
  %v3765 = vld [vmem:[%s3728 + $0x180] sm:$0xff]
  %v3766 = vld [vmem:[%s3728 + $0x188] sm:$0xff]
  %v3767 = vld [vmem:[%s3728 + $0x190] sm:$0xff]
  %v3768 = vld [vmem:[%s3728 + $0x1a0] sm:$0xff]
  %v3769 = vld [vmem:[%s3728 + $0x1a8] sm:$0xff]
  %v3770 = vld [vmem:[%s3728 + $0x1b0] sm:$0xff]
  %v3771 = vld [vmem:[%s3728 + $0x1c0] sm:$0xff]
  %v3772 = vld [vmem:[%s3728 + $0x1c8] sm:$0xff]
  %v3773 = vld [vmem:[%s3728 + $0x1d0] sm:$0xff]
  %v3774 = vld [vmem:[%s3728 + $0x1e0] sm:$0xff]
  %v3775 = vld [vmem:[%s3728 + $0x1e8] sm:$0xff]
  %v3776 = vld [vmem:[%s3728 + $0x1f0] sm:$0xff]
  %v3777 = vld [vmem:[%s3728 + $0x200] sm:$0xff]
  %v3778 = vld [vmem:[%s3728 + $0x208] sm:$0xff]
  %v3779 = vld [vmem:[%s3728 + $0x210] sm:$0xff]
  %v3780 = vld [vmem:[%s3728 + $0x220] sm:$0xff]
  %v3781 = vld [vmem:[%s3728 + $0x228] sm:$0xff]
  %v3782 = vld [vmem:[%s3728 + $0x230] sm:$0xff]
  %v3783 = vld [vmem:[%s3728 + $0x240] sm:$0xff]
  %v3784 = vld [vmem:[%s3728 + $0x248] sm:$0xff]
  %v3785 = vld [vmem:[%s3728 + $0x250] sm:$0xff]
  %v3786 = vld [vmem:[%s3728 + $0x260] sm:$0xff]
  %v3787 = vld [vmem:[%s3728 + $0x268] sm:$0xff]
  %v3788 = vld [vmem:[%s3728 + $0x270] sm:$0xff]
  %v3789 = vld [vmem:[%s3728 + $0x280] sm:$0xff]
  %v3790 = vld [vmem:[%s3728 + $0x288] sm:$0xff]
  %v3791 = vld [vmem:[%s3728 + $0x290] sm:$0xff]
  %v3792 = vld [vmem:[%s3728 + $0x2a0] sm:$0xff]
  %v3793 = vld [vmem:[%s3728 + $0x2a8] sm:$0xff]
  %v3794 = vld [vmem:[%s3728 + $0x2b0] sm:$0xff]
  %v3795 = vld [vmem:[%s3728 + $0x2c0] sm:$0xff]
  %v3796 = vld [vmem:[%s3728 + $0x2c8] sm:$0xff]
  %v3797 = vld [vmem:[%s3728 + $0x2d0] sm:$0xff]
  %v3798 = vld [vmem:[%s3728 + $0x2e0] sm:$0xff]
  %v3799 = vld [vmem:[%s3728 + $0x2e8] sm:$0xff]
  %v3800 = vld [vmem:[%s3728 + $0x2f0] sm:$0xff]
  %v3801 = vld [vmem:[%s3728 + $0x300] sm:$0xff]
  %v3802 = vld [vmem:[%s3728 + $0x308] sm:$0xff]
  %v3803 = vld [vmem:[%s3728 + $0x310] sm:$0xff]
  %v3804 = vld [vmem:[%s3728 + $0x320] sm:$0xff]
  %v3805 = vld [vmem:[%s3728 + $0x328] sm:$0xff]
  %v3806 = vld [vmem:[%s3728 + $0x330] sm:$0xff]
  %v3807 = vpack.c.bf16 %v3730, %v3729
  %v3808 = vpack.c.bf16 %v3732, %v3731
  %v3809 = vpack.c.bf16 %v3734, %v3733
  %v3810 = vpack.c.bf16 %v3736, %v3735
  %v3811 = vpack.c.bf16 %v3738, %v3737
  %v3812 = vpack.c.bf16 %v3740, %v3739
  %v3813 = vpack.c.bf16 %v3742, %v3741
  %v3814 = vpack.c.bf16 %v3744, %v3743
  %v3815 = vpack.c.bf16 %v3746, %v3745
  %v3816 = vpack.c.bf16 %v3748, %v3747
  %v3817 = vpack.c.bf16 %v3750, %v3749
  %v3818 = vpack.c.bf16 %v3752, %v3751
  %v3819 = vpack.c.bf16 %v3754, %v3753
  %v3820 = vpack.c.bf16 %v3756, %v3755
  %v3821 = vpack.c.bf16 %v3758, %v3757
  %v3822 = vpack.c.bf16 %v3760, %v3759
  %v3823 = vpack.c.bf16 %v3762, %v3761
  %v3824 = vpack.c.bf16 %v3764, %v3763
  %v3825 = vpack.c.bf16 %v3766, %v3765
  %v3826 = vpack.c.bf16 %v3768, %v3767
  %v3827 = vpack.c.bf16 %v3770, %v3769
  %v3828 = vpack.c.bf16 %v3772, %v3771
  %v3829 = vpack.c.bf16 %v3774, %v3773
  %v3830 = vpack.c.bf16 %v3776, %v3775
  %v3831 = vpack.c.bf16 %v3778, %v3777
  %v3832 = vpack.c.bf16 %v3780, %v3779
  %v3833 = vpack.c.bf16 %v3782, %v3781
  %v3834 = vpack.c.bf16 %v3784, %v3783
  %v3835 = vpack.c.bf16 %v3786, %v3785
  %v3836 = vpack.c.bf16 %v3788, %v3787
  %v3837 = vpack.c.bf16 %v3790, %v3789
  %v3838 = vpack.c.bf16 %v3792, %v3791
  %v3839 = vpack.c.bf16 %v3794, %v3793
  %v3840 = vpack.c.bf16 %v3796, %v3795
  %v3841 = vpack.c.bf16 %v3798, %v3797
  %v3842 = vpack.c.bf16 %v3800, %v3799
  %v3843 = vld [vmem:[%s1] sm:$0xf]
  %v3844 = vld [vmem:[%s1 + $0x4] sm:$0xf]
  %v3845 = vld [vmem:[%s1 + $0x8] sm:$0xf]
  %v3846 = vld [vmem:[%s1 + $0xc] sm:$0xf]
  %v3847 = vpack.c.bf16 %v3733, %v3732
  %v3848 = vpack.c.bf16 %v3735, %v3734
  %v3849 = vpack.c.bf16 %v3737, %v3736
  %v3850 = vpack.c.bf16 %v3739, %v3738
  %v3851 = vpack.c.bf16 %v3741, %v3740
  %v3852 = vpack.c.bf16 %v3743, %v3742
  %v3853 = vpack.c.bf16 %v3745, %v3744
  %v3854 = vpack.c.bf16 %v3747, %v3746
  %v3855 = vpack.c.bf16 %v3749, %v3748
  %v3856 = vpack.c.bf16 %v3751, %v3750
  %v3857 = vpack.c.bf16 %v3753, %v3752
  %v3858 = vpack.c.bf16 %v3755, %v3754
  %v3859 = vpack.c.bf16 %v3757, %v3756
  %v3860 = vpack.c.bf16 %v3759, %v3758
  %v3861 = vpack.c.bf16 %v3761, %v3760
  %v3862 = vpack.c.bf16 %v3763, %v3762
  %v3863 = vpack.c.bf16 %v3765, %v3764
  %v3864 = vpack.c.bf16 %v3767, %v3766
  %v3865 = vpack.c.bf16 %v3769, %v3768
  %v3866 = vpack.c.bf16 %v3771, %v3770
  %v3867 = vpack.c.bf16 %v3773, %v3772
  %v3868 = vpack.c.bf16 %v3775, %v3774
  %v3869 = vpack.c.bf16 %v3777, %v3776
  %v3870 = vpack.c.bf16 %v3779, %v3778
  %v3871 = vpack.c.bf16 %v3781, %v3780
  %v3872 = vpack.c.bf16 %v3783, %v3782
  %v3873 = vpack.c.bf16 %v3785, %v3784
  %v3874 = vpack.c.bf16 %v3787, %v3786
  %v3875 = vpack.c.bf16 %v3789, %v3788
  %v3876 = vpack.c.bf16 %v3791, %v3790
  %v3877 = vpack.c.bf16 %v3793, %v3792
  %v3878 = vpack.c.bf16 %v3795, %v3794
  %v3879 = vpack.c.bf16 %v3797, %v3796
  %v3880 = vpack.c.bf16 %v3799, %v3798
  %v3881 = vpack.c.bf16 %v3801, %v3800
  %v3882 = vpack.c.bf16 %v3803, %v3802
  %v3883 = vld [vmem:[%s169] sm:$0xf]
  %v3884 = vld [vmem:[%s169 + $0x4] sm:$0xf]
  %v3885 = vld [vmem:[%s169 + $0x8] sm:$0xf]
  %v3886 = vld [vmem:[%s169 + $0xc] sm:$0xf]
  %v3891 = vunpack.c.l.b16 %v3883
  %v3892 = vunpack.c.l.b16 %v3884
  %v3893 = vunpack.c.l.b16 %v3885
  %v3894 = vunpack.c.l.b16 %v3886
  %v3895 = vpack.c.b16 %v3892, %v3891
  %v3896 = vpack.c.b16 %v3894, %v3893
  %v3900 = vsel %vm186, %v3847, 0
  %v3903 = vsel %vm186, %v3848, 0
  %v3906 = vsel %vm186, %v3849, 0
  %v3909 = vsel %vm186, %v3850, 0
  %v3912 = vsel %vm186, %v3851, 0
  %v3915 = vsel %vm186, %v3852, 0
  %v3918 = vsel %vm186, %v3853, 0
  %v3921 = vsel %vm186, %v3854, 0
  %v3924 = vsel %vm186, %v3855, 0
  %v3927 = vsel %vm186, %v3856, 0
  %v3930 = vsel %vm186, %v3857, 0
  %v3933 = vsel %vm186, %v3858, 0
  %v3936 = vsel %vm186, %v3859, 0
  %v3939 = vsel %vm186, %v3860, 0
  %v3942 = vsel %vm186, %v3861, 0
  %v3945 = vsel %vm186, %v3862, 0
  %v3948 = vsel %vm186, %v3863, 0
  %v3951 = vsel %vm186, %v3864, 0
  %v3954 = vsel %vm186, %v3865, 0
  %v3957 = vsel %vm186, %v3866, 0
  %v3960 = vsel %vm186, %v3867, 0
  %v3963 = vsel %vm186, %v3868, 0
  %v3966 = vsel %vm186, %v3869, 0
  %v3969 = vsel %vm186, %v3870, 0
  %v3972 = vsel %vm186, %v3871, 0
  %v3975 = vsel %vm186, %v3872, 0
  %v3978 = vsel %vm186, %v3873, 0
  %v3981 = vsel %vm186, %v3874, 0
  %v3984 = vsel %vm186, %v3875, 0
  %v3987 = vsel %vm186, %v3876, 0
  %v3990 = vsel %vm186, %v3877, 0
  %v3993 = vsel %vm186, %v3878, 0
  %v3996 = vsel %vm186, %v3879, 0
  %v3999 = vsel %vm186, %v3880, 0
  %v4002 = vsel %vm186, %v3881, 0
  %v4005 = vsel %vm186, %v3882, 0
  %4007 = vmatpush.bf16.msra.mxu0 0
  %4008 = vmatpush.bf16.msra.mxu0 0
  %4009 = vmatpush.bf16.msra.mxu0 0
  %4010 = vmatpush.bf16.msra.mxu0 0
  %4011 = vmatpush.bf16.msra.mxu0 0
  %4012 = vmatpush.bf16.msra.mxu0 0
  %4013 = vmatpush.bf16.msra.mxu0 %v3896
  %4014 = vmatpush.bf16.msra.mxu0 %v3895
  %4015 = vmatmul.bf16.gmra.mxu0 %v3900
  %v4016 = vpop.f32.mrf.mxu0
  %v4017 = vadd.f32 0.0, %v4016
  %v4018 = vpop.f32.mrf.mxu0
  %v4019 = vadd.f32 0.0, %v4018
  %4020 = vmatmul.bf16.gmra.mxu0 %v3903
  %v4021 = vpop.f32.mrf.mxu0
  %v4022 = vadd.f32 0.0, %v4021
  %v4023 = vpop.f32.mrf.mxu0
  %v4024 = vadd.f32 0.0, %v4023
  %4025 = vmatmul.bf16.gmra.mxu0 %v3906
  %v4026 = vpop.f32.mrf.mxu0
  %v4027 = vadd.f32 0.0, %v4026
  %v4028 = vpop.f32.mrf.mxu0
  %v4029 = vadd.f32 0.0, %v4028
  %4030 = vmatmul.bf16.gmra.mxu0 %v3909
  %v4031 = vpop.f32.mrf.mxu0
  %v4032 = vadd.f32 0.0, %v4031
  %v4033 = vpop.f32.mrf.mxu0
  %v4034 = vadd.f32 0.0, %v4033
  %4035 = vmatmul.bf16.gmra.mxu0 %v3912
  %v4036 = vpop.f32.mrf.mxu0
  %v4037 = vadd.f32 0.0, %v4036
  %v4038 = vpop.f32.mrf.mxu0
  %v4039 = vadd.f32 0.0, %v4038
  %4040 = vmatmul.bf16.gmra.mxu0 %v3915
  %v4041 = vpop.f32.mrf.mxu0
  %v4042 = vadd.f32 0.0, %v4041
  %v4043 = vpop.f32.mrf.mxu0
  %v4044 = vadd.f32 0.0, %v4043
  %4045 = vmatmul.bf16.gmra.mxu0 %v3918
  %v4046 = vpop.f32.mrf.mxu0
  %v4047 = vadd.f32 0.0, %v4046
  %v4048 = vpop.f32.mrf.mxu0
  %v4049 = vadd.f32 0.0, %v4048
  %4050 = vmatmul.bf16.gmra.mxu0 %v3921
  %v4051 = vpop.f32.mrf.mxu0
  %v4052 = vadd.f32 0.0, %v4051
  %v4053 = vpop.f32.mrf.mxu0
  %v4054 = vadd.f32 0.0, %v4053
  %4055 = vmatmul.bf16.gmra.mxu0 %v3924
  %v4056 = vpop.f32.mrf.mxu0
  %v4057 = vadd.f32 0.0, %v4056
  %v4058 = vpop.f32.mrf.mxu0
  %v4059 = vadd.f32 0.0, %v4058
  %4060 = vmatmul.bf16.gmra.mxu0 %v3927
  %v4061 = vpop.f32.mrf.mxu0
  %v4062 = vadd.f32 0.0, %v4061
  %v4063 = vpop.f32.mrf.mxu0
  %v4064 = vadd.f32 0.0, %v4063
  %4065 = vmatmul.bf16.gmra.mxu0 %v3930
  %v4066 = vpop.f32.mrf.mxu0
  %v4067 = vadd.f32 0.0, %v4066
  %v4068 = vpop.f32.mrf.mxu0
  %v4069 = vadd.f32 0.0, %v4068
  %4070 = vmatmul.bf16.gmra.mxu0 %v3933
  %v4071 = vpop.f32.mrf.mxu0
  %v4072 = vadd.f32 0.0, %v4071
  %v4073 = vpop.f32.mrf.mxu0
  %v4074 = vadd.f32 0.0, %v4073
  %4075 = vmatmul.bf16.gmra.mxu0 %v3936
  %v4076 = vpop.f32.mrf.mxu0
  %v4077 = vadd.f32 0.0, %v4076
  %v4078 = vpop.f32.mrf.mxu0
  %v4079 = vadd.f32 0.0, %v4078
  %4080 = vmatmul.bf16.gmra.mxu0 %v3939
  %v4081 = vpop.f32.mrf.mxu0
  %v4082 = vadd.f32 0.0, %v4081
  %v4083 = vpop.f32.mrf.mxu0
  %v4084 = vadd.f32 0.0, %v4083
  %4085 = vmatmul.bf16.gmra.mxu0 %v3942
  %v4086 = vpop.f32.mrf.mxu0
  %v4087 = vadd.f32 0.0, %v4086
  %v4088 = vpop.f32.mrf.mxu0
  %v4089 = vadd.f32 0.0, %v4088
  %4090 = vmatmul.bf16.gmra.mxu0 %v3945
  %v4091 = vpop.f32.mrf.mxu0
  %v4092 = vadd.f32 0.0, %v4091
  %v4093 = vpop.f32.mrf.mxu0
  %v4094 = vadd.f32 0.0, %v4093
  %4095 = vmatmul.bf16.gmra.mxu0 %v3948
  %v4096 = vpop.f32.mrf.mxu0
  %v4097 = vadd.f32 0.0, %v4096
  %v4098 = vpop.f32.mrf.mxu0
  %v4099 = vadd.f32 0.0, %v4098
  %4100 = vmatmul.bf16.gmra.mxu0 %v3951
  %v4101 = vpop.f32.mrf.mxu0
  %v4102 = vadd.f32 0.0, %v4101
  %v4103 = vpop.f32.mrf.mxu0
  %v4104 = vadd.f32 0.0, %v4103
  %4105 = vmatmul.bf16.gmra.mxu0 %v3954
  %v4106 = vpop.f32.mrf.mxu0
  %v4107 = vadd.f32 0.0, %v4106
  %v4108 = vpop.f32.mrf.mxu0
  %v4109 = vadd.f32 0.0, %v4108
  %4110 = vmatmul.bf16.gmra.mxu0 %v3957
  %v4111 = vpop.f32.mrf.mxu0
  %v4112 = vadd.f32 0.0, %v4111
  %v4113 = vpop.f32.mrf.mxu0
  %v4114 = vadd.f32 0.0, %v4113
  %4115 = vmatmul.bf16.gmra.mxu0 %v3960
  %v4116 = vpop.f32.mrf.mxu0
  %v4117 = vadd.f32 0.0, %v4116
  %v4118 = vpop.f32.mrf.mxu0
  %v4119 = vadd.f32 0.0, %v4118
  %4120 = vmatmul.bf16.gmra.mxu0 %v3963
  %v4121 = vpop.f32.mrf.mxu0
  %v4122 = vadd.f32 0.0, %v4121
  %v4123 = vpop.f32.mrf.mxu0
  %v4124 = vadd.f32 0.0, %v4123
  %4125 = vmatmul.bf16.gmra.mxu0 %v3966
  %v4126 = vpop.f32.mrf.mxu0
  %v4127 = vadd.f32 0.0, %v4126
  %v4128 = vpop.f32.mrf.mxu0
  %v4129 = vadd.f32 0.0, %v4128
  %4130 = vmatmul.bf16.gmra.mxu0 %v3969
  %v4131 = vpop.f32.mrf.mxu0
  %v4132 = vadd.f32 0.0, %v4131
  %v4133 = vpop.f32.mrf.mxu0
  %v4134 = vadd.f32 0.0, %v4133
  %4135 = vmatmul.bf16.gmra.mxu0 %v3972
  %v4136 = vpop.f32.mrf.mxu0
  %v4137 = vadd.f32 0.0, %v4136
  %v4138 = vpop.f32.mrf.mxu0
  %v4139 = vadd.f32 0.0, %v4138
  %4140 = vmatmul.bf16.gmra.mxu0 %v3975
  %v4141 = vpop.f32.mrf.mxu0
  %v4142 = vadd.f32 0.0, %v4141
  %v4143 = vpop.f32.mrf.mxu0
  %v4144 = vadd.f32 0.0, %v4143
  %4145 = vmatmul.bf16.gmra.mxu0 %v3978
  %v4146 = vpop.f32.mrf.mxu0
  %v4147 = vadd.f32 0.0, %v4146
  %v4148 = vpop.f32.mrf.mxu0
  %v4149 = vadd.f32 0.0, %v4148
  %4150 = vmatmul.bf16.gmra.mxu0 %v3981
  %v4151 = vpop.f32.mrf.mxu0
  %v4152 = vadd.f32 0.0, %v4151
  %v4153 = vpop.f32.mrf.mxu0
  %v4154 = vadd.f32 0.0, %v4153
  %4155 = vmatmul.bf16.gmra.mxu0 %v3984
  %v4156 = vpop.f32.mrf.mxu0
  %v4157 = vadd.f32 0.0, %v4156
  %v4158 = vpop.f32.mrf.mxu0
  %v4159 = vadd.f32 0.0, %v4158
  %4160 = vmatmul.bf16.gmra.mxu0 %v3987
  %v4161 = vpop.f32.mrf.mxu0
  %v4162 = vadd.f32 0.0, %v4161
  %v4163 = vpop.f32.mrf.mxu0
  %v4164 = vadd.f32 0.0, %v4163
  %4165 = vmatmul.bf16.gmra.mxu0 %v3990
  %v4166 = vpop.f32.mrf.mxu0
  %v4167 = vadd.f32 0.0, %v4166
  %v4168 = vpop.f32.mrf.mxu0
  %v4169 = vadd.f32 0.0, %v4168
  %4170 = vmatmul.bf16.gmra.mxu0 %v3993
  %v4171 = vpop.f32.mrf.mxu0
  %v4172 = vadd.f32 0.0, %v4171
  %v4173 = vpop.f32.mrf.mxu0
  %v4174 = vadd.f32 0.0, %v4173
  %4175 = vmatmul.bf16.gmra.mxu0 %v3996
  %v4176 = vpop.f32.mrf.mxu0
  %v4177 = vadd.f32 0.0, %v4176
  %v4178 = vpop.f32.mrf.mxu0
  %v4179 = vadd.f32 0.0, %v4178
  %4180 = vmatmul.bf16.gmra.mxu0 %v3999
  %v4181 = vpop.f32.mrf.mxu0
  %v4182 = vadd.f32 0.0, %v4181
  %v4183 = vpop.f32.mrf.mxu0
  %v4184 = vadd.f32 0.0, %v4183
  %4185 = vmatmul.bf16.gmra.mxu0 %v4002
  %v4186 = vpop.f32.mrf.mxu0
  %v4187 = vadd.f32 0.0, %v4186
  %v4188 = vpop.f32.mrf.mxu0
  %v4189 = vadd.f32 0.0, %v4188
  %4190 = vmatmul.bf16.gmra.mxu0 %v4005
  %v4191 = vpop.f32.mrf.mxu0
  %v4192 = vadd.f32 0.0, %v4191
  %v4193 = vpop.f32.mrf.mxu0
  %v4194 = vadd.f32 0.0, %v4193
  %4195 = vdwg.mxu0
  %v4200 = vunpack.c.l.b16 %v3843
  %v4201 = vunpack.c.l.b16 %v3844
  %v4202 = vunpack.c.l.b16 %v3845
  %v4203 = vunpack.c.l.b16 %v3846
  %v4204 = vpack.c.b16 %v4201, %v4200
  %v4205 = vpack.c.b16 %v4203, %v4202
  %v4209 = vsel %vm186, %v3807, 0
  %v4212 = vsel %vm186, %v3808, 0
  %v4215 = vsel %vm186, %v3809, 0
  %v4218 = vsel %vm186, %v3810, 0
  %v4221 = vsel %vm186, %v3811, 0
  %v4224 = vsel %vm186, %v3812, 0
  %v4227 = vsel %vm186, %v3813, 0
  %v4230 = vsel %vm186, %v3814, 0
  %v4233 = vsel %vm186, %v3815, 0
  %v4236 = vsel %vm186, %v3816, 0
  %v4239 = vsel %vm186, %v3817, 0
  %v4242 = vsel %vm186, %v3818, 0
  %v4245 = vsel %vm186, %v3819, 0
  %v4248 = vsel %vm186, %v3820, 0
  %v4251 = vsel %vm186, %v3821, 0
  %v4254 = vsel %vm186, %v3822, 0
  %v4257 = vsel %vm186, %v3823, 0
  %v4260 = vsel %vm186, %v3824, 0
  %v4263 = vsel %vm186, %v3825, 0
  %v4266 = vsel %vm186, %v3826, 0
  %v4269 = vsel %vm186, %v3827, 0
  %v4272 = vsel %vm186, %v3828, 0
  %v4275 = vsel %vm186, %v3829, 0
  %v4278 = vsel %vm186, %v3830, 0
  %v4281 = vsel %vm186, %v3831, 0
  %v4284 = vsel %vm186, %v3832, 0
  %v4287 = vsel %vm186, %v3833, 0
  %v4290 = vsel %vm186, %v3834, 0
  %v4293 = vsel %vm186, %v3835, 0
  %v4296 = vsel %vm186, %v3836, 0
  %v4299 = vsel %vm186, %v3837, 0
  %v4302 = vsel %vm186, %v3838, 0
  %v4305 = vsel %vm186, %v3839, 0
  %v4308 = vsel %vm186, %v3840, 0
  %v4311 = vsel %vm186, %v3841, 0
  %v4314 = vsel %vm186, %v3842, 0
  %4316 = vmatpush.bf16.msra.mxu0 0
  %4317 = vmatpush.bf16.msra.mxu0 0
  %4318 = vmatpush.bf16.msra.mxu0 0
  %4319 = vmatpush.bf16.msra.mxu0 0
  %4320 = vmatpush.bf16.msra.mxu0 0
  %4321 = vmatpush.bf16.msra.mxu0 0
  %4322 = vmatpush.bf16.msra.mxu0 %v4205
  %4323 = vmatpush.bf16.msra.mxu0 %v4204
  %4324 = vmatmul.bf16.gmra.mxu0 %v4209
  %v4325 = vpop.f32.mrf.mxu0
  %v4326 = vadd.f32 %v4017, %v4325
  %v4327 = vpop.f32.mrf.mxu0
  %v4328 = vadd.f32 %v4019, %v4327
  %4329 = vmatmul.bf16.gmra.mxu0 %v4212
  %v4330 = vpop.f32.mrf.mxu0
  %v4331 = vadd.f32 %v4022, %v4330
  %v4332 = vpop.f32.mrf.mxu0
  %v4333 = vadd.f32 %v4024, %v4332
  %4334 = vmatmul.bf16.gmra.mxu0 %v4215
  %v4335 = vpop.f32.mrf.mxu0
  %v4336 = vadd.f32 %v4027, %v4335
  %v4337 = vpop.f32.mrf.mxu0
  %v4338 = vadd.f32 %v4029, %v4337
  %4339 = vmatmul.bf16.gmra.mxu0 %v4218
  %v4340 = vpop.f32.mrf.mxu0
  %v4341 = vadd.f32 %v4032, %v4340
  %v4342 = vpop.f32.mrf.mxu0
  %v4343 = vadd.f32 %v4034, %v4342
  %4344 = vmatmul.bf16.gmra.mxu0 %v4221
  %v4345 = vpop.f32.mrf.mxu0
  %v4346 = vadd.f32 %v4037, %v4345
  %v4347 = vpop.f32.mrf.mxu0
  %v4348 = vadd.f32 %v4039, %v4347
  %4349 = vmatmul.bf16.gmra.mxu0 %v4224
  %v4350 = vpop.f32.mrf.mxu0
  %v4351 = vadd.f32 %v4042, %v4350
  %v4352 = vpop.f32.mrf.mxu0
  %v4353 = vadd.f32 %v4044, %v4352
  %4354 = vmatmul.bf16.gmra.mxu0 %v4227
  %v4355 = vpop.f32.mrf.mxu0
  %v4356 = vadd.f32 %v4047, %v4355
  %v4357 = vpop.f32.mrf.mxu0
  %v4358 = vadd.f32 %v4049, %v4357
  %4359 = vmatmul.bf16.gmra.mxu0 %v4230
  %v4360 = vpop.f32.mrf.mxu0
  %v4361 = vadd.f32 %v4052, %v4360
  %v4362 = vpop.f32.mrf.mxu0
  %v4363 = vadd.f32 %v4054, %v4362
  %4364 = vmatmul.bf16.gmra.mxu0 %v4233
  %v4365 = vpop.f32.mrf.mxu0
  %v4366 = vadd.f32 %v4057, %v4365
  %v4367 = vpop.f32.mrf.mxu0
  %v4368 = vadd.f32 %v4059, %v4367
  %4369 = vmatmul.bf16.gmra.mxu0 %v4236
  %v4370 = vpop.f32.mrf.mxu0
  %v4371 = vadd.f32 %v4062, %v4370
  %v4372 = vpop.f32.mrf.mxu0
  %v4373 = vadd.f32 %v4064, %v4372
  %4374 = vmatmul.bf16.gmra.mxu0 %v4239
  %v4375 = vpop.f32.mrf.mxu0
  %v4376 = vadd.f32 %v4067, %v4375
  %v4377 = vpop.f32.mrf.mxu0
  %v4378 = vadd.f32 %v4069, %v4377
  %4379 = vmatmul.bf16.gmra.mxu0 %v4242
  %v4380 = vpop.f32.mrf.mxu0
  %v4381 = vadd.f32 %v4072, %v4380
  %v4382 = vpop.f32.mrf.mxu0
  %v4383 = vadd.f32 %v4074, %v4382
  %4384 = vmatmul.bf16.gmra.mxu0 %v4245
  %v4385 = vpop.f32.mrf.mxu0
  %v4386 = vadd.f32 %v4077, %v4385
  %v4387 = vpop.f32.mrf.mxu0
  %v4388 = vadd.f32 %v4079, %v4387
  %4389 = vmatmul.bf16.gmra.mxu0 %v4248
  %v4390 = vpop.f32.mrf.mxu0
  %v4391 = vadd.f32 %v4082, %v4390
  %v4392 = vpop.f32.mrf.mxu0
  %v4393 = vadd.f32 %v4084, %v4392
  %4394 = vmatmul.bf16.gmra.mxu0 %v4251
  %v4395 = vpop.f32.mrf.mxu0
  %v4396 = vadd.f32 %v4087, %v4395
  %v4397 = vpop.f32.mrf.mxu0
  %v4398 = vadd.f32 %v4089, %v4397
  %4399 = vmatmul.bf16.gmra.mxu0 %v4254
  %v4400 = vpop.f32.mrf.mxu0
  %v4401 = vadd.f32 %v4092, %v4400
  %v4402 = vpop.f32.mrf.mxu0
  %v4403 = vadd.f32 %v4094, %v4402
  %4404 = vmatmul.bf16.gmra.mxu0 %v4257
  %v4405 = vpop.f32.mrf.mxu0
  %v4406 = vadd.f32 %v4097, %v4405
  %v4407 = vpop.f32.mrf.mxu0
  %v4408 = vadd.f32 %v4099, %v4407
  %4409 = vmatmul.bf16.gmra.mxu0 %v4260
  %v4410 = vpop.f32.mrf.mxu0
  %v4411 = vadd.f32 %v4102, %v4410
  %v4412 = vpop.f32.mrf.mxu0
  %v4413 = vadd.f32 %v4104, %v4412
  %4414 = vmatmul.bf16.gmra.mxu0 %v4263
  %v4415 = vpop.f32.mrf.mxu0
  %v4416 = vadd.f32 %v4107, %v4415
  %v4417 = vpop.f32.mrf.mxu0
  %v4418 = vadd.f32 %v4109, %v4417
  %4419 = vmatmul.bf16.gmra.mxu0 %v4266
  %v4420 = vpop.f32.mrf.mxu0
  %v4421 = vadd.f32 %v4112, %v4420
  %v4422 = vpop.f32.mrf.mxu0
  %v4423 = vadd.f32 %v4114, %v4422
  %4424 = vmatmul.bf16.gmra.mxu0 %v4269
  %v4425 = vpop.f32.mrf.mxu0
  %v4426 = vadd.f32 %v4117, %v4425
  %v4427 = vpop.f32.mrf.mxu0
  %v4428 = vadd.f32 %v4119, %v4427
  %4429 = vmatmul.bf16.gmra.mxu0 %v4272
  %v4430 = vpop.f32.mrf.mxu0
  %v4431 = vadd.f32 %v4122, %v4430
  %v4432 = vpop.f32.mrf.mxu0
  %v4433 = vadd.f32 %v4124, %v4432
  %4434 = vmatmul.bf16.gmra.mxu0 %v4275
  %v4435 = vpop.f32.mrf.mxu0
  %v4436 = vadd.f32 %v4127, %v4435
  %v4437 = vpop.f32.mrf.mxu0
  %v4438 = vadd.f32 %v4129, %v4437
  %4439 = vmatmul.bf16.gmra.mxu0 %v4278
  %v4440 = vpop.f32.mrf.mxu0
  %v4441 = vadd.f32 %v4132, %v4440
  %v4442 = vpop.f32.mrf.mxu0
  %v4443 = vadd.f32 %v4134, %v4442
  %4444 = vmatmul.bf16.gmra.mxu0 %v4281
  %v4445 = vpop.f32.mrf.mxu0
  %v4446 = vadd.f32 %v4137, %v4445
  %v4447 = vpop.f32.mrf.mxu0
  %v4448 = vadd.f32 %v4139, %v4447
  %4449 = vmatmul.bf16.gmra.mxu0 %v4284
  %v4450 = vpop.f32.mrf.mxu0
  %v4451 = vadd.f32 %v4142, %v4450
  %v4452 = vpop.f32.mrf.mxu0
  %v4453 = vadd.f32 %v4144, %v4452
  %4454 = vmatmul.bf16.gmra.mxu0 %v4287
  %v4455 = vpop.f32.mrf.mxu0
  %v4456 = vadd.f32 %v4147, %v4455
  %v4457 = vpop.f32.mrf.mxu0
  %v4458 = vadd.f32 %v4149, %v4457
  %4459 = vmatmul.bf16.gmra.mxu0 %v4290
  %v4460 = vpop.f32.mrf.mxu0
  %v4461 = vadd.f32 %v4152, %v4460
  %v4462 = vpop.f32.mrf.mxu0
  %v4463 = vadd.f32 %v4154, %v4462
  %4464 = vmatmul.bf16.gmra.mxu0 %v4293
  %v4465 = vpop.f32.mrf.mxu0
  %v4466 = vadd.f32 %v4157, %v4465
  %v4467 = vpop.f32.mrf.mxu0
  %v4468 = vadd.f32 %v4159, %v4467
  %4469 = vmatmul.bf16.gmra.mxu0 %v4296
  %v4470 = vpop.f32.mrf.mxu0
  %v4471 = vadd.f32 %v4162, %v4470
  %v4472 = vpop.f32.mrf.mxu0
  %v4473 = vadd.f32 %v4164, %v4472
  %4474 = vmatmul.bf16.gmra.mxu0 %v4299
  %v4475 = vpop.f32.mrf.mxu0
  %v4476 = vadd.f32 %v4167, %v4475
  %v4477 = vpop.f32.mrf.mxu0
  %v4478 = vadd.f32 %v4169, %v4477
  %4479 = vmatmul.bf16.gmra.mxu0 %v4302
  %v4480 = vpop.f32.mrf.mxu0
  %v4481 = vadd.f32 %v4172, %v4480
  %v4482 = vpop.f32.mrf.mxu0
  %v4483 = vadd.f32 %v4174, %v4482
  %4484 = vmatmul.bf16.gmra.mxu0 %v4305
  %v4485 = vpop.f32.mrf.mxu0
  %v4486 = vadd.f32 %v4177, %v4485
  %v4487 = vpop.f32.mrf.mxu0
  %v4488 = vadd.f32 %v4179, %v4487
  %4489 = vmatmul.bf16.gmra.mxu0 %v4308
  %v4490 = vpop.f32.mrf.mxu0
  %v4491 = vadd.f32 %v4182, %v4490
  %v4492 = vpop.f32.mrf.mxu0
  %v4493 = vadd.f32 %v4184, %v4492
  %4494 = vmatmul.bf16.gmra.mxu0 %v4311
  %v4495 = vpop.f32.mrf.mxu0
  %v4496 = vadd.f32 %v4187, %v4495
  %v4497 = vpop.f32.mrf.mxu0
  %v4498 = vadd.f32 %v4189, %v4497
  %4499 = vmatmul.bf16.gmra.mxu0 %v4314
  %v4500 = vpop.f32.mrf.mxu0
  %v4501 = vadd.f32 %v4192, %v4500
  %v4502 = vpop.f32.mrf.mxu0
  %v4503 = vadd.f32 %v4194, %v4502
  %4504 = vdwg.mxu0
  %v4505 = vpack.c.bf16 %v3802, %v3801
  %v4506 = vpack.c.bf16 %v3804, %v3803
  %v4507 = vpack.c.bf16 %v3806, %v3805
  %v4508 = vld [vmem:[%s796] sm:$0xf]
  %v4509 = vld [vmem:[%s796 + $0x4] sm:$0xf]
  %v4510 = vld [vmem:[%s796 + $0x8] sm:$0xf]
  %v4511 = vld [vmem:[%s796 + $0xc] sm:$0xf]
  %v4516 = vunpack.c.l.b16 %v4508
  %v4517 = vunpack.c.l.b16 %v4509
  %v4518 = vunpack.c.l.b16 %v4510
  %v4519 = vunpack.c.l.b16 %v4511
  %v4520 = vpack.c.b16 %v4517, %v4516
  %v4521 = vpack.c.b16 %v4519, %v4518
  %v4525 = vsel %vm186, %v4505, 0
  %v4528 = vsel %vm186, %v4506, 0
  %v4531 = vsel %vm186, %v4507, 0
  %4533 = vmatpush.bf16.msra.mxu0 0
  %4534 = vmatpush.bf16.msra.mxu0 0
  %4535 = vmatpush.bf16.msra.mxu0 0
  %4536 = vmatpush.bf16.msra.mxu0 0
  %4537 = vmatpush.bf16.msra.mxu0 0
  %4538 = vmatpush.bf16.msra.mxu0 0
  %4539 = vmatpush.bf16.msra.mxu0 %v4521
  %4540 = vmatpush.bf16.msra.mxu0 %v4520
  %4541 = vmatmul.bf16.gmra.mxu0 %v4218
  %v4542 = vpop.f32.mrf.mxu0
  %v4543 = vadd.f32 0.0, %v4542
  %v4544 = vpop.f32.mrf.mxu0
  %v4545 = vadd.f32 0.0, %v4544
  %4546 = vmatmul.bf16.gmra.mxu0 %v4221
  %v4547 = vpop.f32.mrf.mxu0
  %v4548 = vadd.f32 0.0, %v4547
  %v4549 = vpop.f32.mrf.mxu0
  %v4550 = vadd.f32 0.0, %v4549
  %4551 = vmatmul.bf16.gmra.mxu0 %v4224
  %v4552 = vpop.f32.mrf.mxu0
  %v4553 = vadd.f32 0.0, %v4552
  %v4554 = vpop.f32.mrf.mxu0
  %v4555 = vadd.f32 0.0, %v4554
  %4556 = vmatmul.bf16.gmra.mxu0 %v4227
  %v4557 = vpop.f32.mrf.mxu0
  %v4558 = vadd.f32 0.0, %v4557
  %v4559 = vpop.f32.mrf.mxu0
  %v4560 = vadd.f32 0.0, %v4559
  %4561 = vmatmul.bf16.gmra.mxu0 %v4230
  %v4562 = vpop.f32.mrf.mxu0
  %v4563 = vadd.f32 0.0, %v4562
  %v4564 = vpop.f32.mrf.mxu0
  %v4565 = vadd.f32 0.0, %v4564
  %4566 = vmatmul.bf16.gmra.mxu0 %v4233
  %v4567 = vpop.f32.mrf.mxu0
  %v4568 = vadd.f32 0.0, %v4567
  %v4569 = vpop.f32.mrf.mxu0
  %v4570 = vadd.f32 0.0, %v4569
  %4571 = vmatmul.bf16.gmra.mxu0 %v4236
  %v4572 = vpop.f32.mrf.mxu0
  %v4573 = vadd.f32 0.0, %v4572
  %v4574 = vpop.f32.mrf.mxu0
  %v4575 = vadd.f32 0.0, %v4574
  %4576 = vmatmul.bf16.gmra.mxu0 %v4239
  %v4577 = vpop.f32.mrf.mxu0
  %v4578 = vadd.f32 0.0, %v4577
  %v4579 = vpop.f32.mrf.mxu0
  %v4580 = vadd.f32 0.0, %v4579
  %4581 = vmatmul.bf16.gmra.mxu0 %v4242
  %v4582 = vpop.f32.mrf.mxu0
  %v4583 = vadd.f32 0.0, %v4582
  %v4584 = vpop.f32.mrf.mxu0
  %v4585 = vadd.f32 0.0, %v4584
  %4586 = vmatmul.bf16.gmra.mxu0 %v4245
  %v4587 = vpop.f32.mrf.mxu0
  %v4588 = vadd.f32 0.0, %v4587
  %v4589 = vpop.f32.mrf.mxu0
  %v4590 = vadd.f32 0.0, %v4589
  %4591 = vmatmul.bf16.gmra.mxu0 %v4248
  %v4592 = vpop.f32.mrf.mxu0
  %v4593 = vadd.f32 0.0, %v4592
  %v4594 = vpop.f32.mrf.mxu0
  %v4595 = vadd.f32 0.0, %v4594
  %4596 = vmatmul.bf16.gmra.mxu0 %v4251
  %v4597 = vpop.f32.mrf.mxu0
  %v4598 = vadd.f32 0.0, %v4597
  %v4599 = vpop.f32.mrf.mxu0
  %v4600 = vadd.f32 0.0, %v4599
  %4601 = vmatmul.bf16.gmra.mxu0 %v4254
  %v4602 = vpop.f32.mrf.mxu0
  %v4603 = vadd.f32 0.0, %v4602
  %v4604 = vpop.f32.mrf.mxu0
  %v4605 = vadd.f32 0.0, %v4604
  %4606 = vmatmul.bf16.gmra.mxu0 %v4257
  %v4607 = vpop.f32.mrf.mxu0
  %v4608 = vadd.f32 0.0, %v4607
  %v4609 = vpop.f32.mrf.mxu0
  %v4610 = vadd.f32 0.0, %v4609
  %4611 = vmatmul.bf16.gmra.mxu0 %v4260
  %v4612 = vpop.f32.mrf.mxu0
  %v4613 = vadd.f32 0.0, %v4612
  %v4614 = vpop.f32.mrf.mxu0
  %v4615 = vadd.f32 0.0, %v4614
  %4616 = vmatmul.bf16.gmra.mxu0 %v4263
  %v4617 = vpop.f32.mrf.mxu0
  %v4618 = vadd.f32 0.0, %v4617
  %v4619 = vpop.f32.mrf.mxu0
  %v4620 = vadd.f32 0.0, %v4619
  %4621 = vmatmul.bf16.gmra.mxu0 %v4266
  %v4622 = vpop.f32.mrf.mxu0
  %v4623 = vadd.f32 0.0, %v4622
  %v4624 = vpop.f32.mrf.mxu0
  %v4625 = vadd.f32 0.0, %v4624
  %4626 = vmatmul.bf16.gmra.mxu0 %v4269
  %v4627 = vpop.f32.mrf.mxu0
  %v4628 = vadd.f32 0.0, %v4627
  %v4629 = vpop.f32.mrf.mxu0
  %v4630 = vadd.f32 0.0, %v4629
  %4631 = vmatmul.bf16.gmra.mxu0 %v4272
  %v4632 = vpop.f32.mrf.mxu0
  %v4633 = vadd.f32 0.0, %v4632
  %v4634 = vpop.f32.mrf.mxu0
  %v4635 = vadd.f32 0.0, %v4634
  %4636 = vmatmul.bf16.gmra.mxu0 %v4275
  %v4637 = vpop.f32.mrf.mxu0
  %v4638 = vadd.f32 0.0, %v4637
  %v4639 = vpop.f32.mrf.mxu0
  %v4640 = vadd.f32 0.0, %v4639
  %4641 = vmatmul.bf16.gmra.mxu0 %v4278
  %v4642 = vpop.f32.mrf.mxu0
  %v4643 = vadd.f32 0.0, %v4642
  %v4644 = vpop.f32.mrf.mxu0
  %v4645 = vadd.f32 0.0, %v4644
  %4646 = vmatmul.bf16.gmra.mxu0 %v4281
  %v4647 = vpop.f32.mrf.mxu0
  %v4648 = vadd.f32 0.0, %v4647
  %v4649 = vpop.f32.mrf.mxu0
  %v4650 = vadd.f32 0.0, %v4649
  %4651 = vmatmul.bf16.gmra.mxu0 %v4284
  %v4652 = vpop.f32.mrf.mxu0
  %v4653 = vadd.f32 0.0, %v4652
  %v4654 = vpop.f32.mrf.mxu0
  %v4655 = vadd.f32 0.0, %v4654
  %4656 = vmatmul.bf16.gmra.mxu0 %v4287
  %v4657 = vpop.f32.mrf.mxu0
  %v4658 = vadd.f32 0.0, %v4657
  %v4659 = vpop.f32.mrf.mxu0
  %v4660 = vadd.f32 0.0, %v4659
  %4661 = vmatmul.bf16.gmra.mxu0 %v4290
  %v4662 = vpop.f32.mrf.mxu0
  %v4663 = vadd.f32 0.0, %v4662
  %v4664 = vpop.f32.mrf.mxu0
  %v4665 = vadd.f32 0.0, %v4664
  %4666 = vmatmul.bf16.gmra.mxu0 %v4293
  %v4667 = vpop.f32.mrf.mxu0
  %v4668 = vadd.f32 0.0, %v4667
  %v4669 = vpop.f32.mrf.mxu0
  %v4670 = vadd.f32 0.0, %v4669
  %4671 = vmatmul.bf16.gmra.mxu0 %v4296
  %v4672 = vpop.f32.mrf.mxu0
  %v4673 = vadd.f32 0.0, %v4672
  %v4674 = vpop.f32.mrf.mxu0
  %v4675 = vadd.f32 0.0, %v4674
  %4676 = vmatmul.bf16.gmra.mxu0 %v4299
  %v4677 = vpop.f32.mrf.mxu0
  %v4678 = vadd.f32 0.0, %v4677
  %v4679 = vpop.f32.mrf.mxu0
  %v4680 = vadd.f32 0.0, %v4679
  %4681 = vmatmul.bf16.gmra.mxu0 %v4302
  %v4682 = vpop.f32.mrf.mxu0
  %v4683 = vadd.f32 0.0, %v4682
  %v4684 = vpop.f32.mrf.mxu0
  %v4685 = vadd.f32 0.0, %v4684
  %4686 = vmatmul.bf16.gmra.mxu0 %v4305
  %v4687 = vpop.f32.mrf.mxu0
  %v4688 = vadd.f32 0.0, %v4687
  %v4689 = vpop.f32.mrf.mxu0
  %v4690 = vadd.f32 0.0, %v4689
  %4691 = vmatmul.bf16.gmra.mxu0 %v4308
  %v4692 = vpop.f32.mrf.mxu0
  %v4693 = vadd.f32 0.0, %v4692
  %v4694 = vpop.f32.mrf.mxu0
  %v4695 = vadd.f32 0.0, %v4694
  %4696 = vmatmul.bf16.gmra.mxu0 %v4311
  %v4697 = vpop.f32.mrf.mxu0
  %v4698 = vadd.f32 0.0, %v4697
  %v4699 = vpop.f32.mrf.mxu0
  %v4700 = vadd.f32 0.0, %v4699
  %4701 = vmatmul.bf16.gmra.mxu0 %v4314
  %v4702 = vpop.f32.mrf.mxu0
  %v4703 = vadd.f32 0.0, %v4702
  %v4704 = vpop.f32.mrf.mxu0
  %v4705 = vadd.f32 0.0, %v4704
  %4706 = vmatmul.bf16.gmra.mxu0 %v4525
  %v4707 = vpop.f32.mrf.mxu0
  %v4708 = vadd.f32 0.0, %v4707
  %v4709 = vpop.f32.mrf.mxu0
  %v4710 = vadd.f32 0.0, %v4709
  %4711 = vmatmul.bf16.gmra.mxu0 %v4528
  %v4712 = vpop.f32.mrf.mxu0
  %v4713 = vadd.f32 0.0, %v4712
  %v4714 = vpop.f32.mrf.mxu0
  %v4715 = vadd.f32 0.0, %v4714
  %4716 = vmatmul.bf16.gmra.mxu0 %v4531
  %v4717 = vpop.f32.mrf.mxu0
  %v4718 = vadd.f32 0.0, %v4717
  %v4719 = vpop.f32.mrf.mxu0
  %v4720 = vadd.f32 0.0, %v4719
  %4721 = vdwg.mxu0
  %v4722 = vadd.f32 %v4326, %v4543
  %v4723 = vadd.f32 %v4328, %v4545
  %v4724 = vadd.f32 %v4331, %v4548
  %v4725 = vadd.f32 %v4333, %v4550
  %v4726 = vadd.f32 %v4336, %v4553
  %v4727 = vadd.f32 %v4338, %v4555
  %v4728 = vadd.f32 %v4341, %v4558
  %v4729 = vadd.f32 %v4343, %v4560
  %v4730 = vadd.f32 %v4346, %v4563
  %v4731 = vadd.f32 %v4348, %v4565
  %v4732 = vadd.f32 %v4351, %v4568
  %v4733 = vadd.f32 %v4353, %v4570
  %v4734 = vadd.f32 %v4356, %v4573
  %v4735 = vadd.f32 %v4358, %v4575
  %v4736 = vadd.f32 %v4361, %v4578
  %v4737 = vadd.f32 %v4363, %v4580
  %v4738 = vadd.f32 %v4366, %v4583
  %v4739 = vadd.f32 %v4368, %v4585
  %v4740 = vadd.f32 %v4371, %v4588
  %v4741 = vadd.f32 %v4373, %v4590
  %v4742 = vadd.f32 %v4376, %v4593
  %v4743 = vadd.f32 %v4378, %v4595
  %v4744 = vadd.f32 %v4381, %v4598
  %v4745 = vadd.f32 %v4383, %v4600
  %v4746 = vadd.f32 %v4386, %v4603
  %v4747 = vadd.f32 %v4388, %v4605
  %v4748 = vadd.f32 %v4391, %v4608
  %v4749 = vadd.f32 %v4393, %v4610
  %v4750 = vadd.f32 %v4396, %v4613
  %v4751 = vadd.f32 %v4398, %v4615
  %v4752 = vadd.f32 %v4401, %v4618
  %v4753 = vadd.f32 %v4403, %v4620
  %v4754 = vadd.f32 %v4406, %v4623
  %v4755 = vadd.f32 %v4408, %v4625
  %v4756 = vadd.f32 %v4411, %v4628
  %v4757 = vadd.f32 %v4413, %v4630
  %v4758 = vadd.f32 %v4416, %v4633
  %v4759 = vadd.f32 %v4418, %v4635
  %v4760 = vadd.f32 %v4421, %v4638
  %v4761 = vadd.f32 %v4423, %v4640
  %v4762 = vadd.f32 %v4426, %v4643
  %v4763 = vadd.f32 %v4428, %v4645
  %v4764 = vadd.f32 %v4431, %v4648
  %v4765 = vadd.f32 %v4433, %v4650
  %v4766 = vadd.f32 %v4436, %v4653
  %v4767 = vadd.f32 %v4438, %v4655
  %v4768 = vadd.f32 %v4441, %v4658
  %v4769 = vadd.f32 %v4443, %v4660
  %v4770 = vadd.f32 %v4446, %v4663
  %v4771 = vadd.f32 %v4448, %v4665
  %v4772 = vadd.f32 %v4451, %v4668
  %v4773 = vadd.f32 %v4453, %v4670
  %v4774 = vadd.f32 %v4456, %v4673
  %v4775 = vadd.f32 %v4458, %v4675
  %v4776 = vadd.f32 %v4461, %v4678
  %v4777 = vadd.f32 %v4463, %v4680
  %v4778 = vadd.f32 %v4466, %v4683
  %v4779 = vadd.f32 %v4468, %v4685
  %v4780 = vadd.f32 %v4471, %v4688
  %v4781 = vadd.f32 %v4473, %v4690
  %v4782 = vadd.f32 %v4476, %v4693
  %v4783 = vadd.f32 %v4478, %v4695
  %v4784 = vadd.f32 %v4481, %v4698
  %v4785 = vadd.f32 %v4483, %v4700
  %v4786 = vadd.f32 %v4486, %v4703
  %v4787 = vadd.f32 %v4488, %v4705
  %v4788 = vadd.f32 %v4491, %v4708
  %v4789 = vadd.f32 %v4493, %v4710
  %v4790 = vadd.f32 %v4496, %v4713
  %v4791 = vadd.f32 %v4498, %v4715
  %v4792 = vadd.f32 %v4501, %v4718
  %v4793 = vadd.f32 %v4503, %v4720
  %v4794 = vld [vmem:[%s3728 + $0x1] sm:$0xff]
  %v4795 = vld [vmem:[%s3728 + $0x9] sm:$0xff]
  %v4796 = vld [vmem:[%s3728 + $0x11] sm:$0xff]
  %v4797 = vld [vmem:[%s3728 + $0x21] sm:$0xff]
  %v4798 = vld [vmem:[%s3728 + $0x29] sm:$0xff]
  %v4799 = vld [vmem:[%s3728 + $0x31] sm:$0xff]
  %v4800 = vld [vmem:[%s3728 + $0x41] sm:$0xff]
  %v4801 = vld [vmem:[%s3728 + $0x49] sm:$0xff]
  %v4802 = vld [vmem:[%s3728 + $0x51] sm:$0xff]
  %v4803 = vld [vmem:[%s3728 + $0x61] sm:$0xff]
  %v4804 = vld [vmem:[%s3728 + $0x69] sm:$0xff]
  %v4805 = vld [vmem:[%s3728 + $0x71] sm:$0xff]
  %v4806 = vld [vmem:[%s3728 + $0x81] sm:$0xff]
  %v4807 = vld [vmem:[%s3728 + $0x89] sm:$0xff]
  %v4808 = vld [vmem:[%s3728 + $0x91] sm:$0xff]
  %v4809 = vld [vmem:[%s3728 + $0xa1] sm:$0xff]
  %v4810 = vld [vmem:[%s3728 + $0xa9] sm:$0xff]
  %v4811 = vld [vmem:[%s3728 + $0xb1] sm:$0xff]
  %v4812 = vld [vmem:[%s3728 + $0xc1] sm:$0xff]
  %v4813 = vld [vmem:[%s3728 + $0xc9] sm:$0xff]
  %v4814 = vld [vmem:[%s3728 + $0xd1] sm:$0xff]
  %v4815 = vld [vmem:[%s3728 + $0xe1] sm:$0xff]
  %v4816 = vld [vmem:[%s3728 + $0xe9] sm:$0xff]
  %v4817 = vld [vmem:[%s3728 + $0xf1] sm:$0xff]
  %v4818 = vld [vmem:[%s3728 + $0x101] sm:$0xff]
  %v4819 = vld [vmem:[%s3728 + $0x109] sm:$0xff]
  %v4820 = vld [vmem:[%s3728 + $0x111] sm:$0xff]
  %v4821 = vld [vmem:[%s3728 + $0x121] sm:$0xff]
  %v4822 = vld [vmem:[%s3728 + $0x129] sm:$0xff]
  %v4823 = vld [vmem:[%s3728 + $0x131] sm:$0xff]
  %v4824 = vld [vmem:[%s3728 + $0x141] sm:$0xff]
  %v4825 = vld [vmem:[%s3728 + $0x149] sm:$0xff]
  %v4826 = vld [vmem:[%s3728 + $0x151] sm:$0xff]
  %v4827 = vld [vmem:[%s3728 + $0x161] sm:$0xff]
  %v4828 = vld [vmem:[%s3728 + $0x169] sm:$0xff]
  %v4829 = vld [vmem:[%s3728 + $0x171] sm:$0xff]
  %v4830 = vld [vmem:[%s3728 + $0x181] sm:$0xff]
  %v4831 = vld [vmem:[%s3728 + $0x189] sm:$0xff]
  %v4832 = vld [vmem:[%s3728 + $0x191] sm:$0xff]
  %v4833 = vld [vmem:[%s3728 + $0x1a1] sm:$0xff]
  %v4834 = vld [vmem:[%s3728 + $0x1a9] sm:$0xff]
  %v4835 = vld [vmem:[%s3728 + $0x1b1] sm:$0xff]
  %v4836 = vld [vmem:[%s3728 + $0x1c1] sm:$0xff]
  %v4837 = vld [vmem:[%s3728 + $0x1c9] sm:$0xff]
  %v4838 = vld [vmem:[%s3728 + $0x1d1] sm:$0xff]
  %v4839 = vld [vmem:[%s3728 + $0x1e1] sm:$0xff]
  %v4840 = vld [vmem:[%s3728 + $0x1e9] sm:$0xff]
  %v4841 = vld [vmem:[%s3728 + $0x1f1] sm:$0xff]
  %v4842 = vld [vmem:[%s3728 + $0x201] sm:$0xff]
  %v4843 = vld [vmem:[%s3728 + $0x209] sm:$0xff]
  %v4844 = vld [vmem:[%s3728 + $0x211] sm:$0xff]
  %v4845 = vld [vmem:[%s3728 + $0x221] sm:$0xff]
  %v4846 = vld [vmem:[%s3728 + $0x229] sm:$0xff]
  %v4847 = vld [vmem:[%s3728 + $0x231] sm:$0xff]
  %v4848 = vld [vmem:[%s3728 + $0x241] sm:$0xff]
  %v4849 = vld [vmem:[%s3728 + $0x249] sm:$0xff]
  %v4850 = vld [vmem:[%s3728 + $0x251] sm:$0xff]
  %v4851 = vld [vmem:[%s3728 + $0x261] sm:$0xff]
  %v4852 = vld [vmem:[%s3728 + $0x269] sm:$0xff]
  %v4853 = vld [vmem:[%s3728 + $0x271] sm:$0xff]
  %v4854 = vld [vmem:[%s3728 + $0x281] sm:$0xff]
  %v4855 = vld [vmem:[%s3728 + $0x289] sm:$0xff]
  %v4856 = vld [vmem:[%s3728 + $0x291] sm:$0xff]
  %v4857 = vld [vmem:[%s3728 + $0x2a1] sm:$0xff]
  %v4858 = vld [vmem:[%s3728 + $0x2a9] sm:$0xff]
  %v4859 = vld [vmem:[%s3728 + $0x2b1] sm:$0xff]
  %v4860 = vld [vmem:[%s3728 + $0x2c1] sm:$0xff]
  %v4861 = vld [vmem:[%s3728 + $0x2c9] sm:$0xff]
  %v4862 = vld [vmem:[%s3728 + $0x2d1] sm:$0xff]
  %v4863 = vld [vmem:[%s3728 + $0x2e1] sm:$0xff]
  %v4864 = vld [vmem:[%s3728 + $0x2e9] sm:$0xff]
  %v4865 = vld [vmem:[%s3728 + $0x2f1] sm:$0xff]
  %v4866 = vld [vmem:[%s3728 + $0x301] sm:$0xff]
  %v4867 = vld [vmem:[%s3728 + $0x309] sm:$0xff]
  %v4868 = vld [vmem:[%s3728 + $0x311] sm:$0xff]
  %v4869 = vld [vmem:[%s3728 + $0x321] sm:$0xff]
  %v4870 = vld [vmem:[%s3728 + $0x329] sm:$0xff]
  %v4871 = vld [vmem:[%s3728 + $0x331] sm:$0xff]
  %v4872 = vpack.c.bf16 %v4795, %v4794
  %v4873 = vpack.c.bf16 %v4797, %v4796
  %v4874 = vpack.c.bf16 %v4799, %v4798
  %v4875 = vpack.c.bf16 %v4801, %v4800
  %v4876 = vpack.c.bf16 %v4803, %v4802
  %v4877 = vpack.c.bf16 %v4805, %v4804
  %v4878 = vpack.c.bf16 %v4807, %v4806
  %v4879 = vpack.c.bf16 %v4809, %v4808
  %v4880 = vpack.c.bf16 %v4811, %v4810
  %v4881 = vpack.c.bf16 %v4813, %v4812
  %v4882 = vpack.c.bf16 %v4815, %v4814
  %v4883 = vpack.c.bf16 %v4817, %v4816
  %v4884 = vpack.c.bf16 %v4819, %v4818
  %v4885 = vpack.c.bf16 %v4821, %v4820
  %v4886 = vpack.c.bf16 %v4823, %v4822
  %v4887 = vpack.c.bf16 %v4825, %v4824
  %v4888 = vpack.c.bf16 %v4827, %v4826
  %v4889 = vpack.c.bf16 %v4829, %v4828
  %v4890 = vpack.c.bf16 %v4831, %v4830
  %v4891 = vpack.c.bf16 %v4833, %v4832
  %v4892 = vpack.c.bf16 %v4835, %v4834
  %v4893 = vpack.c.bf16 %v4837, %v4836
  %v4894 = vpack.c.bf16 %v4839, %v4838
  %v4895 = vpack.c.bf16 %v4841, %v4840
  %v4896 = vpack.c.bf16 %v4843, %v4842
  %v4897 = vpack.c.bf16 %v4845, %v4844
  %v4898 = vpack.c.bf16 %v4847, %v4846
  %v4899 = vpack.c.bf16 %v4849, %v4848
  %v4900 = vpack.c.bf16 %v4851, %v4850
  %v4901 = vpack.c.bf16 %v4853, %v4852
  %v4902 = vpack.c.bf16 %v4855, %v4854
  %v4903 = vpack.c.bf16 %v4857, %v4856
  %v4904 = vpack.c.bf16 %v4859, %v4858
  %v4905 = vpack.c.bf16 %v4861, %v4860
  %v4906 = vpack.c.bf16 %v4863, %v4862
  %v4907 = vpack.c.bf16 %v4865, %v4864
  %v4908 = vld [vmem:[%s1197] sm:$0xf]
  %v4909 = vld [vmem:[%s1197 + $0x4] sm:$0xf]
  %v4910 = vld [vmem:[%s1197 + $0x8] sm:$0xf]
  %v4911 = vld [vmem:[%s1197 + $0xc] sm:$0xf]
  %v4916 = vunpack.c.l.b16 %v4908
  %v4917 = vunpack.c.l.b16 %v4909
  %v4918 = vunpack.c.l.b16 %v4910
  %v4919 = vunpack.c.l.b16 %v4911
  %v4920 = vpack.c.b16 %v4917, %v4916
  %v4921 = vpack.c.b16 %v4919, %v4918
  %v4925 = vsel %vm186, %v4872, 0
  %v4928 = vsel %vm186, %v4873, 0
  %v4931 = vsel %vm186, %v4874, 0
  %v4934 = vsel %vm186, %v4875, 0
  %v4937 = vsel %vm186, %v4876, 0
  %v4940 = vsel %vm186, %v4877, 0
  %v4943 = vsel %vm186, %v4878, 0
  %v4946 = vsel %vm186, %v4879, 0
  %v4949 = vsel %vm186, %v4880, 0
  %v4952 = vsel %vm186, %v4881, 0
  %v4955 = vsel %vm186, %v4882, 0
  %v4958 = vsel %vm186, %v4883, 0
  %v4961 = vsel %vm186, %v4884, 0
  %v4964 = vsel %vm186, %v4885, 0
  %v4967 = vsel %vm186, %v4886, 0
  %v4970 = vsel %vm186, %v4887, 0
  %v4973 = vsel %vm186, %v4888, 0
  %v4976 = vsel %vm186, %v4889, 0
  %v4979 = vsel %vm186, %v4890, 0
  %v4982 = vsel %vm186, %v4891, 0
  %v4985 = vsel %vm186, %v4892, 0
  %v4988 = vsel %vm186, %v4893, 0
  %v4991 = vsel %vm186, %v4894, 0
  %v4994 = vsel %vm186, %v4895, 0
  %v4997 = vsel %vm186, %v4896, 0
  %v5000 = vsel %vm186, %v4897, 0
  %v5003 = vsel %vm186, %v4898, 0
  %v5006 = vsel %vm186, %v4899, 0
  %v5009 = vsel %vm186, %v4900, 0
  %v5012 = vsel %vm186, %v4901, 0
  %v5015 = vsel %vm186, %v4902, 0
  %v5018 = vsel %vm186, %v4903, 0
  %v5021 = vsel %vm186, %v4904, 0
  %v5024 = vsel %vm186, %v4905, 0
  %v5027 = vsel %vm186, %v4906, 0
  %v5030 = vsel %vm186, %v4907, 0
  %5032 = vmatpush.bf16.msra.mxu0 0
  %5033 = vmatpush.bf16.msra.mxu0 0
  %5034 = vmatpush.bf16.msra.mxu0 0
  %5035 = vmatpush.bf16.msra.mxu0 0
  %5036 = vmatpush.bf16.msra.mxu0 0
  %5037 = vmatpush.bf16.msra.mxu0 0
  %5038 = vmatpush.bf16.msra.mxu0 %v4921
  %5039 = vmatpush.bf16.msra.mxu0 %v4920
  %5040 = vmatmul.bf16.gmra.mxu0 %v4925
  %v5041 = vpop.f32.mrf.mxu0
  %v5042 = vadd.f32 0.0, %v5041
  %v5043 = vpop.f32.mrf.mxu0
  %v5044 = vadd.f32 0.0, %v5043
  %5045 = vmatmul.bf16.gmra.mxu0 %v4928
  %v5046 = vpop.f32.mrf.mxu0
  %v5047 = vadd.f32 0.0, %v5046
  %v5048 = vpop.f32.mrf.mxu0
  %v5049 = vadd.f32 0.0, %v5048
  %5050 = vmatmul.bf16.gmra.mxu0 %v4931
  %v5051 = vpop.f32.mrf.mxu0
  %v5052 = vadd.f32 0.0, %v5051
  %v5053 = vpop.f32.mrf.mxu0
  %v5054 = vadd.f32 0.0, %v5053
  %5055 = vmatmul.bf16.gmra.mxu0 %v4934
  %v5056 = vpop.f32.mrf.mxu0
  %v5057 = vadd.f32 0.0, %v5056
  %v5058 = vpop.f32.mrf.mxu0
  %v5059 = vadd.f32 0.0, %v5058
  %5060 = vmatmul.bf16.gmra.mxu0 %v4937
  %v5061 = vpop.f32.mrf.mxu0
  %v5062 = vadd.f32 0.0, %v5061
  %v5063 = vpop.f32.mrf.mxu0
  %v5064 = vadd.f32 0.0, %v5063
  %5065 = vmatmul.bf16.gmra.mxu0 %v4940
  %v5066 = vpop.f32.mrf.mxu0
  %v5067 = vadd.f32 0.0, %v5066
  %v5068 = vpop.f32.mrf.mxu0
  %v5069 = vadd.f32 0.0, %v5068
  %5070 = vmatmul.bf16.gmra.mxu0 %v4943
  %v5071 = vpop.f32.mrf.mxu0
  %v5072 = vadd.f32 0.0, %v5071
  %v5073 = vpop.f32.mrf.mxu0
  %v5074 = vadd.f32 0.0, %v5073
  %5075 = vmatmul.bf16.gmra.mxu0 %v4946
  %v5076 = vpop.f32.mrf.mxu0
  %v5077 = vadd.f32 0.0, %v5076
  %v5078 = vpop.f32.mrf.mxu0
  %v5079 = vadd.f32 0.0, %v5078
  %5080 = vmatmul.bf16.gmra.mxu0 %v4949
  %v5081 = vpop.f32.mrf.mxu0
  %v5082 = vadd.f32 0.0, %v5081
  %v5083 = vpop.f32.mrf.mxu0
  %v5084 = vadd.f32 0.0, %v5083
  %5085 = vmatmul.bf16.gmra.mxu0 %v4952
  %v5086 = vpop.f32.mrf.mxu0
  %v5087 = vadd.f32 0.0, %v5086
  %v5088 = vpop.f32.mrf.mxu0
  %v5089 = vadd.f32 0.0, %v5088
  %5090 = vmatmul.bf16.gmra.mxu0 %v4955
  %v5091 = vpop.f32.mrf.mxu0
  %v5092 = vadd.f32 0.0, %v5091
  %v5093 = vpop.f32.mrf.mxu0
  %v5094 = vadd.f32 0.0, %v5093
  %5095 = vmatmul.bf16.gmra.mxu0 %v4958
  %v5096 = vpop.f32.mrf.mxu0
  %v5097 = vadd.f32 0.0, %v5096
  %v5098 = vpop.f32.mrf.mxu0
  %v5099 = vadd.f32 0.0, %v5098
  %5100 = vmatmul.bf16.gmra.mxu0 %v4961
  %v5101 = vpop.f32.mrf.mxu0
  %v5102 = vadd.f32 0.0, %v5101
  %v5103 = vpop.f32.mrf.mxu0
  %v5104 = vadd.f32 0.0, %v5103
  %5105 = vmatmul.bf16.gmra.mxu0 %v4964
  %v5106 = vpop.f32.mrf.mxu0
  %v5107 = vadd.f32 0.0, %v5106
  %v5108 = vpop.f32.mrf.mxu0
  %v5109 = vadd.f32 0.0, %v5108
  %5110 = vmatmul.bf16.gmra.mxu0 %v4967
  %v5111 = vpop.f32.mrf.mxu0
  %v5112 = vadd.f32 0.0, %v5111
  %v5113 = vpop.f32.mrf.mxu0
  %v5114 = vadd.f32 0.0, %v5113
  %5115 = vmatmul.bf16.gmra.mxu0 %v4970
  %v5116 = vpop.f32.mrf.mxu0
  %v5117 = vadd.f32 0.0, %v5116
  %v5118 = vpop.f32.mrf.mxu0
  %v5119 = vadd.f32 0.0, %v5118
  %5120 = vmatmul.bf16.gmra.mxu0 %v4973
  %v5121 = vpop.f32.mrf.mxu0
  %v5122 = vadd.f32 0.0, %v5121
  %v5123 = vpop.f32.mrf.mxu0
  %v5124 = vadd.f32 0.0, %v5123
  %5125 = vmatmul.bf16.gmra.mxu0 %v4976
  %v5126 = vpop.f32.mrf.mxu0
  %v5127 = vadd.f32 0.0, %v5126
  %v5128 = vpop.f32.mrf.mxu0
  %v5129 = vadd.f32 0.0, %v5128
  %5130 = vmatmul.bf16.gmra.mxu0 %v4979
  %v5131 = vpop.f32.mrf.mxu0
  %v5132 = vadd.f32 0.0, %v5131
  %v5133 = vpop.f32.mrf.mxu0
  %v5134 = vadd.f32 0.0, %v5133
  %5135 = vmatmul.bf16.gmra.mxu0 %v4982
  %v5136 = vpop.f32.mrf.mxu0
  %v5137 = vadd.f32 0.0, %v5136
  %v5138 = vpop.f32.mrf.mxu0
  %v5139 = vadd.f32 0.0, %v5138
  %5140 = vmatmul.bf16.gmra.mxu0 %v4985
  %v5141 = vpop.f32.mrf.mxu0
  %v5142 = vadd.f32 0.0, %v5141
  %v5143 = vpop.f32.mrf.mxu0
  %v5144 = vadd.f32 0.0, %v5143
  %5145 = vmatmul.bf16.gmra.mxu0 %v4988
  %v5146 = vpop.f32.mrf.mxu0
  %v5147 = vadd.f32 0.0, %v5146
  %v5148 = vpop.f32.mrf.mxu0
  %v5149 = vadd.f32 0.0, %v5148
  %5150 = vmatmul.bf16.gmra.mxu0 %v4991
  %v5151 = vpop.f32.mrf.mxu0
  %v5152 = vadd.f32 0.0, %v5151
  %v5153 = vpop.f32.mrf.mxu0
  %v5154 = vadd.f32 0.0, %v5153
  %5155 = vmatmul.bf16.gmra.mxu0 %v4994
  %v5156 = vpop.f32.mrf.mxu0
  %v5157 = vadd.f32 0.0, %v5156
  %v5158 = vpop.f32.mrf.mxu0
  %v5159 = vadd.f32 0.0, %v5158
  %5160 = vmatmul.bf16.gmra.mxu0 %v4997
  %v5161 = vpop.f32.mrf.mxu0
  %v5162 = vadd.f32 0.0, %v5161
  %v5163 = vpop.f32.mrf.mxu0
  %v5164 = vadd.f32 0.0, %v5163
  %5165 = vmatmul.bf16.gmra.mxu0 %v5000
  %v5166 = vpop.f32.mrf.mxu0
  %v5167 = vadd.f32 0.0, %v5166
  %v5168 = vpop.f32.mrf.mxu0
  %v5169 = vadd.f32 0.0, %v5168
  %5170 = vmatmul.bf16.gmra.mxu0 %v5003
  %v5171 = vpop.f32.mrf.mxu0
  %v5172 = vadd.f32 0.0, %v5171
  %v5173 = vpop.f32.mrf.mxu0
  %v5174 = vadd.f32 0.0, %v5173
  %5175 = vmatmul.bf16.gmra.mxu0 %v5006
  %v5176 = vpop.f32.mrf.mxu0
  %v5177 = vadd.f32 0.0, %v5176
  %v5178 = vpop.f32.mrf.mxu0
  %v5179 = vadd.f32 0.0, %v5178
  %5180 = vmatmul.bf16.gmra.mxu0 %v5009
  %v5181 = vpop.f32.mrf.mxu0
  %v5182 = vadd.f32 0.0, %v5181
  %v5183 = vpop.f32.mrf.mxu0
  %v5184 = vadd.f32 0.0, %v5183
  %5185 = vmatmul.bf16.gmra.mxu0 %v5012
  %v5186 = vpop.f32.mrf.mxu0
  %v5187 = vadd.f32 0.0, %v5186
  %v5188 = vpop.f32.mrf.mxu0
  %v5189 = vadd.f32 0.0, %v5188
  %5190 = vmatmul.bf16.gmra.mxu0 %v5015
  %v5191 = vpop.f32.mrf.mxu0
  %v5192 = vadd.f32 0.0, %v5191
  %v5193 = vpop.f32.mrf.mxu0
  %v5194 = vadd.f32 0.0, %v5193
  %5195 = vmatmul.bf16.gmra.mxu0 %v5018
  %v5196 = vpop.f32.mrf.mxu0
  %v5197 = vadd.f32 0.0, %v5196
  %v5198 = vpop.f32.mrf.mxu0
  %v5199 = vadd.f32 0.0, %v5198
  %5200 = vmatmul.bf16.gmra.mxu0 %v5021
  %v5201 = vpop.f32.mrf.mxu0
  %v5202 = vadd.f32 0.0, %v5201
  %v5203 = vpop.f32.mrf.mxu0
  %v5204 = vadd.f32 0.0, %v5203
  %5205 = vmatmul.bf16.gmra.mxu0 %v5024
  %v5206 = vpop.f32.mrf.mxu0
  %v5207 = vadd.f32 0.0, %v5206
  %v5208 = vpop.f32.mrf.mxu0
  %v5209 = vadd.f32 0.0, %v5208
  %5210 = vmatmul.bf16.gmra.mxu0 %v5027
  %v5211 = vpop.f32.mrf.mxu0
  %v5212 = vadd.f32 0.0, %v5211
  %v5213 = vpop.f32.mrf.mxu0
  %v5214 = vadd.f32 0.0, %v5213
  %5215 = vmatmul.bf16.gmra.mxu0 %v5030
  %v5216 = vpop.f32.mrf.mxu0
  %v5217 = vadd.f32 0.0, %v5216
  %v5218 = vpop.f32.mrf.mxu0
  %v5219 = vadd.f32 0.0, %v5218
  %5220 = vdwg.mxu0
  %v5221 = vadd.f32 %v4722, %v5042
  %v5222 = vadd.f32 %v4723, %v5044
  %v5223 = vadd.f32 %v4724, %v5047
  %v5224 = vadd.f32 %v4725, %v5049
  %v5225 = vadd.f32 %v4726, %v5052
  %v5226 = vadd.f32 %v4727, %v5054
  %v5227 = vadd.f32 %v4728, %v5057
  %v5228 = vadd.f32 %v4729, %v5059
  %v5229 = vadd.f32 %v4730, %v5062
  %v5230 = vadd.f32 %v4731, %v5064
  %v5231 = vadd.f32 %v4732, %v5067
  %v5232 = vadd.f32 %v4733, %v5069
  %v5233 = vadd.f32 %v4734, %v5072
  %v5234 = vadd.f32 %v4735, %v5074
  %v5235 = vadd.f32 %v4736, %v5077
  %v5236 = vadd.f32 %v4737, %v5079
  %v5237 = vadd.f32 %v4738, %v5082
  %v5238 = vadd.f32 %v4739, %v5084
  %v5239 = vadd.f32 %v4740, %v5087
  %v5240 = vadd.f32 %v4741, %v5089
  %v5241 = vadd.f32 %v4742, %v5092
  %v5242 = vadd.f32 %v4743, %v5094
  %v5243 = vadd.f32 %v4744, %v5097
  %v5244 = vadd.f32 %v4745, %v5099
  %v5245 = vadd.f32 %v4746, %v5102
  %v5246 = vadd.f32 %v4747, %v5104
  %v5247 = vadd.f32 %v4748, %v5107
  %v5248 = vadd.f32 %v4749, %v5109
  %v5249 = vadd.f32 %v4750, %v5112
  %v5250 = vadd.f32 %v4751, %v5114
  %v5251 = vadd.f32 %v4752, %v5117
  %v5252 = vadd.f32 %v4753, %v5119
  %v5253 = vadd.f32 %v4754, %v5122
  %v5254 = vadd.f32 %v4755, %v5124
  %v5255 = vadd.f32 %v4756, %v5127
  %v5256 = vadd.f32 %v4757, %v5129
  %v5257 = vadd.f32 %v4758, %v5132
  %v5258 = vadd.f32 %v4759, %v5134
  %v5259 = vadd.f32 %v4760, %v5137
  %v5260 = vadd.f32 %v4761, %v5139
  %v5261 = vadd.f32 %v4762, %v5142
  %v5262 = vadd.f32 %v4763, %v5144
  %v5263 = vadd.f32 %v4764, %v5147
  %v5264 = vadd.f32 %v4765, %v5149
  %v5265 = vadd.f32 %v4766, %v5152
  %v5266 = vadd.f32 %v4767, %v5154
  %v5267 = vadd.f32 %v4768, %v5157
  %v5268 = vadd.f32 %v4769, %v5159
  %v5269 = vadd.f32 %v4770, %v5162
  %v5270 = vadd.f32 %v4771, %v5164
  %v5271 = vadd.f32 %v4772, %v5167
  %v5272 = vadd.f32 %v4773, %v5169
  %v5273 = vadd.f32 %v4774, %v5172
  %v5274 = vadd.f32 %v4775, %v5174
  %v5275 = vadd.f32 %v4776, %v5177
  %v5276 = vadd.f32 %v4777, %v5179
  %v5277 = vadd.f32 %v4778, %v5182
  %v5278 = vadd.f32 %v4779, %v5184
  %v5279 = vadd.f32 %v4780, %v5187
  %v5280 = vadd.f32 %v4781, %v5189
  %v5281 = vadd.f32 %v4782, %v5192
  %v5282 = vadd.f32 %v4783, %v5194
  %v5283 = vadd.f32 %v4784, %v5197
  %v5284 = vadd.f32 %v4785, %v5199
  %v5285 = vadd.f32 %v4786, %v5202
  %v5286 = vadd.f32 %v4787, %v5204
  %v5287 = vadd.f32 %v4788, %v5207
  %v5288 = vadd.f32 %v4789, %v5209
  %v5289 = vadd.f32 %v4790, %v5212
  %v5290 = vadd.f32 %v4791, %v5214
  %v5291 = vadd.f32 %v4792, %v5217
  %v5292 = vadd.f32 %v4793, %v5219
  %v5293 = vpack.c.bf16 %v4798, %v4797
  %v5294 = vpack.c.bf16 %v4800, %v4799
  %v5295 = vpack.c.bf16 %v4802, %v4801
  %v5296 = vpack.c.bf16 %v4804, %v4803
  %v5297 = vpack.c.bf16 %v4806, %v4805
  %v5298 = vpack.c.bf16 %v4808, %v4807
  %v5299 = vpack.c.bf16 %v4810, %v4809
  %v5300 = vpack.c.bf16 %v4812, %v4811
  %v5301 = vpack.c.bf16 %v4814, %v4813
  %v5302 = vpack.c.bf16 %v4816, %v4815
  %v5303 = vpack.c.bf16 %v4818, %v4817
  %v5304 = vpack.c.bf16 %v4820, %v4819
  %v5305 = vpack.c.bf16 %v4822, %v4821
  %v5306 = vpack.c.bf16 %v4824, %v4823
  %v5307 = vpack.c.bf16 %v4826, %v4825
  %v5308 = vpack.c.bf16 %v4828, %v4827
  %v5309 = vpack.c.bf16 %v4830, %v4829
  %v5310 = vpack.c.bf16 %v4832, %v4831
  %v5311 = vpack.c.bf16 %v4834, %v4833
  %v5312 = vpack.c.bf16 %v4836, %v4835
  %v5313 = vpack.c.bf16 %v4838, %v4837
  %v5314 = vpack.c.bf16 %v4840, %v4839
  %v5315 = vpack.c.bf16 %v4842, %v4841
  %v5316 = vpack.c.bf16 %v4844, %v4843
  %v5317 = vpack.c.bf16 %v4846, %v4845
  %v5318 = vpack.c.bf16 %v4848, %v4847
  %v5319 = vpack.c.bf16 %v4850, %v4849
  %v5320 = vpack.c.bf16 %v4852, %v4851
  %v5321 = vpack.c.bf16 %v4854, %v4853
  %v5322 = vpack.c.bf16 %v4856, %v4855
  %v5323 = vpack.c.bf16 %v4858, %v4857
  %v5324 = vpack.c.bf16 %v4860, %v4859
  %v5325 = vpack.c.bf16 %v4862, %v4861
  %v5326 = vpack.c.bf16 %v4864, %v4863
  %v5327 = vpack.c.bf16 %v4866, %v4865
  %v5328 = vpack.c.bf16 %v4868, %v4867
  %v5329 = vld [vmem:[%s1619] sm:$0xf]
  %v5330 = vld [vmem:[%s1619 + $0x4] sm:$0xf]
  %v5331 = vld [vmem:[%s1619 + $0x8] sm:$0xf]
  %v5332 = vld [vmem:[%s1619 + $0xc] sm:$0xf]
  %v5337 = vunpack.c.l.b16 %v5329
  %v5338 = vunpack.c.l.b16 %v5330
  %v5339 = vunpack.c.l.b16 %v5331
  %v5340 = vunpack.c.l.b16 %v5332
  %v5341 = vpack.c.b16 %v5338, %v5337
  %v5342 = vpack.c.b16 %v5340, %v5339
  %v5346 = vsel %vm186, %v5293, 0
  %v5349 = vsel %vm186, %v5294, 0
  %v5352 = vsel %vm186, %v5295, 0
  %v5355 = vsel %vm186, %v5296, 0
  %v5358 = vsel %vm186, %v5297, 0
  %v5361 = vsel %vm186, %v5298, 0
  %v5364 = vsel %vm186, %v5299, 0
  %v5367 = vsel %vm186, %v5300, 0
  %v5370 = vsel %vm186, %v5301, 0
  %v5373 = vsel %vm186, %v5302, 0
  %v5376 = vsel %vm186, %v5303, 0
  %v5379 = vsel %vm186, %v5304, 0
  %v5382 = vsel %vm186, %v5305, 0
  %v5385 = vsel %vm186, %v5306, 0
  %v5388 = vsel %vm186, %v5307, 0
  %v5391 = vsel %vm186, %v5308, 0
  %v5394 = vsel %vm186, %v5309, 0
  %v5397 = vsel %vm186, %v5310, 0
  %v5400 = vsel %vm186, %v5311, 0
  %v5403 = vsel %vm186, %v5312, 0
  %v5406 = vsel %vm186, %v5313, 0
  %v5409 = vsel %vm186, %v5314, 0
  %v5412 = vsel %vm186, %v5315, 0
  %v5415 = vsel %vm186, %v5316, 0
  %v5418 = vsel %vm186, %v5317, 0
  %v5421 = vsel %vm186, %v5318, 0
  %v5424 = vsel %vm186, %v5319, 0
  %v5427 = vsel %vm186, %v5320, 0
  %v5430 = vsel %vm186, %v5321, 0
  %v5433 = vsel %vm186, %v5322, 0
  %v5436 = vsel %vm186, %v5323, 0
  %v5439 = vsel %vm186, %v5324, 0
  %v5442 = vsel %vm186, %v5325, 0
  %v5445 = vsel %vm186, %v5326, 0
  %v5448 = vsel %vm186, %v5327, 0
  %v5451 = vsel %vm186, %v5328, 0
  %5453 = vmatpush.bf16.msra.mxu0 0
  %5454 = vmatpush.bf16.msra.mxu0 0
  %5455 = vmatpush.bf16.msra.mxu0 0
  %5456 = vmatpush.bf16.msra.mxu0 0
  %5457 = vmatpush.bf16.msra.mxu0 0
  %5458 = vmatpush.bf16.msra.mxu0 0
  %5459 = vmatpush.bf16.msra.mxu0 %v5342
  %5460 = vmatpush.bf16.msra.mxu0 %v5341
  %5461 = vmatmul.bf16.gmra.mxu0 %v5346
  %v5462 = vpop.f32.mrf.mxu0
  %v5463 = vadd.f32 0.0, %v5462
  %v5464 = vpop.f32.mrf.mxu0
  %v5465 = vadd.f32 0.0, %v5464
  %5466 = vmatmul.bf16.gmra.mxu0 %v5349
  %v5467 = vpop.f32.mrf.mxu0
  %v5468 = vadd.f32 0.0, %v5467
  %v5469 = vpop.f32.mrf.mxu0
  %v5470 = vadd.f32 0.0, %v5469
  %5471 = vmatmul.bf16.gmra.mxu0 %v5352
  %v5472 = vpop.f32.mrf.mxu0
  %v5473 = vadd.f32 0.0, %v5472
  %v5474 = vpop.f32.mrf.mxu0
  %v5475 = vadd.f32 0.0, %v5474
  %5476 = vmatmul.bf16.gmra.mxu0 %v5355
  %v5477 = vpop.f32.mrf.mxu0
  %v5478 = vadd.f32 0.0, %v5477
  %v5479 = vpop.f32.mrf.mxu0
  %v5480 = vadd.f32 0.0, %v5479
  %5481 = vmatmul.bf16.gmra.mxu0 %v5358
  %v5482 = vpop.f32.mrf.mxu0
  %v5483 = vadd.f32 0.0, %v5482
  %v5484 = vpop.f32.mrf.mxu0
  %v5485 = vadd.f32 0.0, %v5484
  %5486 = vmatmul.bf16.gmra.mxu0 %v5361
  %v5487 = vpop.f32.mrf.mxu0
  %v5488 = vadd.f32 0.0, %v5487
  %v5489 = vpop.f32.mrf.mxu0
  %v5490 = vadd.f32 0.0, %v5489
  %5491 = vmatmul.bf16.gmra.mxu0 %v5364
  %v5492 = vpop.f32.mrf.mxu0
  %v5493 = vadd.f32 0.0, %v5492
  %v5494 = vpop.f32.mrf.mxu0
  %v5495 = vadd.f32 0.0, %v5494
  %5496 = vmatmul.bf16.gmra.mxu0 %v5367
  %v5497 = vpop.f32.mrf.mxu0
  %v5498 = vadd.f32 0.0, %v5497
  %v5499 = vpop.f32.mrf.mxu0
  %v5500 = vadd.f32 0.0, %v5499
  %5501 = vmatmul.bf16.gmra.mxu0 %v5370
  %v5502 = vpop.f32.mrf.mxu0
  %v5503 = vadd.f32 0.0, %v5502
  %v5504 = vpop.f32.mrf.mxu0
  %v5505 = vadd.f32 0.0, %v5504
  %5506 = vmatmul.bf16.gmra.mxu0 %v5373
  %v5507 = vpop.f32.mrf.mxu0
  %v5508 = vadd.f32 0.0, %v5507
  %v5509 = vpop.f32.mrf.mxu0
  %v5510 = vadd.f32 0.0, %v5509
  %5511 = vmatmul.bf16.gmra.mxu0 %v5376
  %v5512 = vpop.f32.mrf.mxu0
  %v5513 = vadd.f32 0.0, %v5512
  %v5514 = vpop.f32.mrf.mxu0
  %v5515 = vadd.f32 0.0, %v5514
  %5516 = vmatmul.bf16.gmra.mxu0 %v5379
  %v5517 = vpop.f32.mrf.mxu0
  %v5518 = vadd.f32 0.0, %v5517
  %v5519 = vpop.f32.mrf.mxu0
  %v5520 = vadd.f32 0.0, %v5519
  %5521 = vmatmul.bf16.gmra.mxu0 %v5382
  %v5522 = vpop.f32.mrf.mxu0
  %v5523 = vadd.f32 0.0, %v5522
  %v5524 = vpop.f32.mrf.mxu0
  %v5525 = vadd.f32 0.0, %v5524
  %5526 = vmatmul.bf16.gmra.mxu0 %v5385
  %v5527 = vpop.f32.mrf.mxu0
  %v5528 = vadd.f32 0.0, %v5527
  %v5529 = vpop.f32.mrf.mxu0
  %v5530 = vadd.f32 0.0, %v5529
  %5531 = vmatmul.bf16.gmra.mxu0 %v5388
  %v5532 = vpop.f32.mrf.mxu0
  %v5533 = vadd.f32 0.0, %v5532
  %v5534 = vpop.f32.mrf.mxu0
  %v5535 = vadd.f32 0.0, %v5534
  %5536 = vmatmul.bf16.gmra.mxu0 %v5391
  %v5537 = vpop.f32.mrf.mxu0
  %v5538 = vadd.f32 0.0, %v5537
  %v5539 = vpop.f32.mrf.mxu0
  %v5540 = vadd.f32 0.0, %v5539
  %5541 = vmatmul.bf16.gmra.mxu0 %v5394
  %v5542 = vpop.f32.mrf.mxu0
  %v5543 = vadd.f32 0.0, %v5542
  %v5544 = vpop.f32.mrf.mxu0
  %v5545 = vadd.f32 0.0, %v5544
  %5546 = vmatmul.bf16.gmra.mxu0 %v5397
  %v5547 = vpop.f32.mrf.mxu0
  %v5548 = vadd.f32 0.0, %v5547
  %v5549 = vpop.f32.mrf.mxu0
  %v5550 = vadd.f32 0.0, %v5549
  %5551 = vmatmul.bf16.gmra.mxu0 %v5400
  %v5552 = vpop.f32.mrf.mxu0
  %v5553 = vadd.f32 0.0, %v5552
  %v5554 = vpop.f32.mrf.mxu0
  %v5555 = vadd.f32 0.0, %v5554
  %5556 = vmatmul.bf16.gmra.mxu0 %v5403
  %v5557 = vpop.f32.mrf.mxu0
  %v5558 = vadd.f32 0.0, %v5557
  %v5559 = vpop.f32.mrf.mxu0
  %v5560 = vadd.f32 0.0, %v5559
  %5561 = vmatmul.bf16.gmra.mxu0 %v5406
  %v5562 = vpop.f32.mrf.mxu0
  %v5563 = vadd.f32 0.0, %v5562
  %v5564 = vpop.f32.mrf.mxu0
  %v5565 = vadd.f32 0.0, %v5564
  %5566 = vmatmul.bf16.gmra.mxu0 %v5409
  %v5567 = vpop.f32.mrf.mxu0
  %v5568 = vadd.f32 0.0, %v5567
  %v5569 = vpop.f32.mrf.mxu0
  %v5570 = vadd.f32 0.0, %v5569
  %5571 = vmatmul.bf16.gmra.mxu0 %v5412
  %v5572 = vpop.f32.mrf.mxu0
  %v5573 = vadd.f32 0.0, %v5572
  %v5574 = vpop.f32.mrf.mxu0
  %v5575 = vadd.f32 0.0, %v5574
  %5576 = vmatmul.bf16.gmra.mxu0 %v5415
  %v5577 = vpop.f32.mrf.mxu0
  %v5578 = vadd.f32 0.0, %v5577
  %v5579 = vpop.f32.mrf.mxu0
  %v5580 = vadd.f32 0.0, %v5579
  %5581 = vmatmul.bf16.gmra.mxu0 %v5418
  %v5582 = vpop.f32.mrf.mxu0
  %v5583 = vadd.f32 0.0, %v5582
  %v5584 = vpop.f32.mrf.mxu0
  %v5585 = vadd.f32 0.0, %v5584
  %5586 = vmatmul.bf16.gmra.mxu0 %v5421
  %v5587 = vpop.f32.mrf.mxu0
  %v5588 = vadd.f32 0.0, %v5587
  %v5589 = vpop.f32.mrf.mxu0
  %v5590 = vadd.f32 0.0, %v5589
  %5591 = vmatmul.bf16.gmra.mxu0 %v5424
  %v5592 = vpop.f32.mrf.mxu0
  %v5593 = vadd.f32 0.0, %v5592
  %v5594 = vpop.f32.mrf.mxu0
  %v5595 = vadd.f32 0.0, %v5594
  %5596 = vmatmul.bf16.gmra.mxu0 %v5427
  %v5597 = vpop.f32.mrf.mxu0
  %v5598 = vadd.f32 0.0, %v5597
  %v5599 = vpop.f32.mrf.mxu0
  %v5600 = vadd.f32 0.0, %v5599
  %5601 = vmatmul.bf16.gmra.mxu0 %v5430
  %v5602 = vpop.f32.mrf.mxu0
  %v5603 = vadd.f32 0.0, %v5602
  %v5604 = vpop.f32.mrf.mxu0
  %v5605 = vadd.f32 0.0, %v5604
  %5606 = vmatmul.bf16.gmra.mxu0 %v5433
  %v5607 = vpop.f32.mrf.mxu0
  %v5608 = vadd.f32 0.0, %v5607
  %v5609 = vpop.f32.mrf.mxu0
  %v5610 = vadd.f32 0.0, %v5609
  %5611 = vmatmul.bf16.gmra.mxu0 %v5436
  %v5612 = vpop.f32.mrf.mxu0
  %v5613 = vadd.f32 0.0, %v5612
  %v5614 = vpop.f32.mrf.mxu0
  %v5615 = vadd.f32 0.0, %v5614
  %5616 = vmatmul.bf16.gmra.mxu0 %v5439
  %v5617 = vpop.f32.mrf.mxu0
  %v5618 = vadd.f32 0.0, %v5617
  %v5619 = vpop.f32.mrf.mxu0
  %v5620 = vadd.f32 0.0, %v5619
  %5621 = vmatmul.bf16.gmra.mxu0 %v5442
  %v5622 = vpop.f32.mrf.mxu0
  %v5623 = vadd.f32 0.0, %v5622
  %v5624 = vpop.f32.mrf.mxu0
  %v5625 = vadd.f32 0.0, %v5624
  %5626 = vmatmul.bf16.gmra.mxu0 %v5445
  %v5627 = vpop.f32.mrf.mxu0
  %v5628 = vadd.f32 0.0, %v5627
  %v5629 = vpop.f32.mrf.mxu0
  %v5630 = vadd.f32 0.0, %v5629
  %5631 = vmatmul.bf16.gmra.mxu0 %v5448
  %v5632 = vpop.f32.mrf.mxu0
  %v5633 = vadd.f32 0.0, %v5632
  %v5634 = vpop.f32.mrf.mxu0
  %v5635 = vadd.f32 0.0, %v5634
  %5636 = vmatmul.bf16.gmra.mxu0 %v5451
  %v5637 = vpop.f32.mrf.mxu0
  %v5638 = vadd.f32 0.0, %v5637
  %v5639 = vpop.f32.mrf.mxu0
  %v5640 = vadd.f32 0.0, %v5639
  %5641 = vdwg.mxu0
  %v5642 = vadd.f32 %v5221, %v5463
  %v5643 = vadd.f32 %v5222, %v5465
  %v5644 = vadd.f32 %v5223, %v5468
  %v5645 = vadd.f32 %v5224, %v5470
  %v5646 = vadd.f32 %v5225, %v5473
  %v5647 = vadd.f32 %v5226, %v5475
  %v5648 = vadd.f32 %v5227, %v5478
  %v5649 = vadd.f32 %v5228, %v5480
  %v5650 = vadd.f32 %v5229, %v5483
  %v5651 = vadd.f32 %v5230, %v5485
  %v5652 = vadd.f32 %v5231, %v5488
  %v5653 = vadd.f32 %v5232, %v5490
  %v5654 = vadd.f32 %v5233, %v5493
  %v5655 = vadd.f32 %v5234, %v5495
  %v5656 = vadd.f32 %v5235, %v5498
  %v5657 = vadd.f32 %v5236, %v5500
  %v5658 = vadd.f32 %v5237, %v5503
  %v5659 = vadd.f32 %v5238, %v5505
  %v5660 = vadd.f32 %v5239, %v5508
  %v5661 = vadd.f32 %v5240, %v5510
  %v5662 = vadd.f32 %v5241, %v5513
  %v5663 = vadd.f32 %v5242, %v5515
  %v5664 = vadd.f32 %v5243, %v5518
  %v5665 = vadd.f32 %v5244, %v5520
  %v5666 = vadd.f32 %v5245, %v5523
  %v5667 = vadd.f32 %v5246, %v5525
  %v5668 = vadd.f32 %v5247, %v5528
  %v5669 = vadd.f32 %v5248, %v5530
  %v5670 = vadd.f32 %v5249, %v5533
  %v5671 = vadd.f32 %v5250, %v5535
  %v5672 = vadd.f32 %v5251, %v5538
  %v5673 = vadd.f32 %v5252, %v5540
  %v5674 = vadd.f32 %v5253, %v5543
  %v5675 = vadd.f32 %v5254, %v5545
  %v5676 = vadd.f32 %v5255, %v5548
  %v5677 = vadd.f32 %v5256, %v5550
  %v5678 = vadd.f32 %v5257, %v5553
  %v5679 = vadd.f32 %v5258, %v5555
  %v5680 = vadd.f32 %v5259, %v5558
  %v5681 = vadd.f32 %v5260, %v5560
  %v5682 = vadd.f32 %v5261, %v5563
  %v5683 = vadd.f32 %v5262, %v5565
  %v5684 = vadd.f32 %v5263, %v5568
  %v5685 = vadd.f32 %v5264, %v5570
  %v5686 = vadd.f32 %v5265, %v5573
  %v5687 = vadd.f32 %v5266, %v5575
  %v5688 = vadd.f32 %v5267, %v5578
  %v5689 = vadd.f32 %v5268, %v5580
  %v5690 = vadd.f32 %v5269, %v5583
  %v5691 = vadd.f32 %v5270, %v5585
  %v5692 = vadd.f32 %v5271, %v5588
  %v5693 = vadd.f32 %v5272, %v5590
  %v5694 = vadd.f32 %v5273, %v5593
  %v5695 = vadd.f32 %v5274, %v5595
  %v5696 = vadd.f32 %v5275, %v5598
  %v5697 = vadd.f32 %v5276, %v5600
  %v5698 = vadd.f32 %v5277, %v5603
  %v5699 = vadd.f32 %v5278, %v5605
  %v5700 = vadd.f32 %v5279, %v5608
  %v5701 = vadd.f32 %v5280, %v5610
  %v5702 = vadd.f32 %v5281, %v5613
  %v5703 = vadd.f32 %v5282, %v5615
  %v5704 = vadd.f32 %v5283, %v5618
  %v5705 = vadd.f32 %v5284, %v5620
  %v5706 = vadd.f32 %v5285, %v5623
  %v5707 = vadd.f32 %v5286, %v5625
  %v5708 = vadd.f32 %v5287, %v5628
  %v5709 = vadd.f32 %v5288, %v5630
  %v5710 = vadd.f32 %v5289, %v5633
  %v5711 = vadd.f32 %v5290, %v5635
  %v5712 = vadd.f32 %v5291, %v5638
  %v5713 = vadd.f32 %v5292, %v5640
  %v5714 = vpack.c.bf16 %v4867, %v4866
  %v5715 = vpack.c.bf16 %v4869, %v4868
  %v5716 = vpack.c.bf16 %v4871, %v4870
  %v5717 = vld [vmem:[%s2008] sm:$0xf]
  %v5718 = vld [vmem:[%s2008 + $0x4] sm:$0xf]
  %v5719 = vld [vmem:[%s2008 + $0x8] sm:$0xf]
  %v5720 = vld [vmem:[%s2008 + $0xc] sm:$0xf]
  %v5725 = vunpack.c.l.b16 %v5717
  %v5726 = vunpack.c.l.b16 %v5718
  %v5727 = vunpack.c.l.b16 %v5719
  %v5728 = vunpack.c.l.b16 %v5720
  %v5729 = vpack.c.b16 %v5726, %v5725
  %v5730 = vpack.c.b16 %v5728, %v5727
  %v5734 = vsel %vm186, %v5714, 0
  %v5737 = vsel %vm186, %v5715, 0
  %v5740 = vsel %vm186, %v5716, 0
  %5742 = vmatpush.bf16.msra.mxu0 0
  %5743 = vmatpush.bf16.msra.mxu0 0
  %5744 = vmatpush.bf16.msra.mxu0 0
  %5745 = vmatpush.bf16.msra.mxu0 0
  %5746 = vmatpush.bf16.msra.mxu0 0
  %5747 = vmatpush.bf16.msra.mxu0 0
  %5748 = vmatpush.bf16.msra.mxu0 %v5730
  %5749 = vmatpush.bf16.msra.mxu0 %v5729
  %5750 = vmatmul.bf16.gmra.mxu0 %v4934
  %v5751 = vpop.f32.mrf.mxu0
  %v5752 = vadd.f32 0.0, %v5751
  %v5753 = vpop.f32.mrf.mxu0
  %v5754 = vadd.f32 0.0, %v5753
  %5755 = vmatmul.bf16.gmra.mxu0 %v4937
  %v5756 = vpop.f32.mrf.mxu0
  %v5757 = vadd.f32 0.0, %v5756
  %v5758 = vpop.f32.mrf.mxu0
  %v5759 = vadd.f32 0.0, %v5758
  %5760 = vmatmul.bf16.gmra.mxu0 %v4940
  %v5761 = vpop.f32.mrf.mxu0
  %v5762 = vadd.f32 0.0, %v5761
  %v5763 = vpop.f32.mrf.mxu0
  %v5764 = vadd.f32 0.0, %v5763
  %5765 = vmatmul.bf16.gmra.mxu0 %v4943
  %v5766 = vpop.f32.mrf.mxu0
  %v5767 = vadd.f32 0.0, %v5766
  %v5768 = vpop.f32.mrf.mxu0
  %v5769 = vadd.f32 0.0, %v5768
  %5770 = vmatmul.bf16.gmra.mxu0 %v4946
  %v5771 = vpop.f32.mrf.mxu0
  %v5772 = vadd.f32 0.0, %v5771
  %v5773 = vpop.f32.mrf.mxu0
  %v5774 = vadd.f32 0.0, %v5773
  %5775 = vmatmul.bf16.gmra.mxu0 %v4949
  %v5776 = vpop.f32.mrf.mxu0
  %v5777 = vadd.f32 0.0, %v5776
  %v5778 = vpop.f32.mrf.mxu0
  %v5779 = vadd.f32 0.0, %v5778
  %5780 = vmatmul.bf16.gmra.mxu0 %v4952
  %v5781 = vpop.f32.mrf.mxu0
  %v5782 = vadd.f32 0.0, %v5781
  %v5783 = vpop.f32.mrf.mxu0
  %v5784 = vadd.f32 0.0, %v5783
  %5785 = vmatmul.bf16.gmra.mxu0 %v4955
  %v5786 = vpop.f32.mrf.mxu0
  %v5787 = vadd.f32 0.0, %v5786
  %v5788 = vpop.f32.mrf.mxu0
  %v5789 = vadd.f32 0.0, %v5788
  %5790 = vmatmul.bf16.gmra.mxu0 %v4958
  %v5791 = vpop.f32.mrf.mxu0
  %v5792 = vadd.f32 0.0, %v5791
  %v5793 = vpop.f32.mrf.mxu0
  %v5794 = vadd.f32 0.0, %v5793
  %5795 = vmatmul.bf16.gmra.mxu0 %v4961
  %v5796 = vpop.f32.mrf.mxu0
  %v5797 = vadd.f32 0.0, %v5796
  %v5798 = vpop.f32.mrf.mxu0
  %v5799 = vadd.f32 0.0, %v5798
  %5800 = vmatmul.bf16.gmra.mxu0 %v4964
  %v5801 = vpop.f32.mrf.mxu0
  %v5802 = vadd.f32 0.0, %v5801
  %v5803 = vpop.f32.mrf.mxu0
  %v5804 = vadd.f32 0.0, %v5803
  %5805 = vmatmul.bf16.gmra.mxu0 %v4967
  %v5806 = vpop.f32.mrf.mxu0
  %v5807 = vadd.f32 0.0, %v5806
  %v5808 = vpop.f32.mrf.mxu0
  %v5809 = vadd.f32 0.0, %v5808
  %5810 = vmatmul.bf16.gmra.mxu0 %v4970
  %v5811 = vpop.f32.mrf.mxu0
  %v5812 = vadd.f32 0.0, %v5811
  %v5813 = vpop.f32.mrf.mxu0
  %v5814 = vadd.f32 0.0, %v5813
  %5815 = vmatmul.bf16.gmra.mxu0 %v4973
  %v5816 = vpop.f32.mrf.mxu0
  %v5817 = vadd.f32 0.0, %v5816
  %v5818 = vpop.f32.mrf.mxu0
  %v5819 = vadd.f32 0.0, %v5818
  %5820 = vmatmul.bf16.gmra.mxu0 %v4976
  %v5821 = vpop.f32.mrf.mxu0
  %v5822 = vadd.f32 0.0, %v5821
  %v5823 = vpop.f32.mrf.mxu0
  %v5824 = vadd.f32 0.0, %v5823
  %5825 = vmatmul.bf16.gmra.mxu0 %v4979
  %v5826 = vpop.f32.mrf.mxu0
  %v5827 = vadd.f32 0.0, %v5826
  %v5828 = vpop.f32.mrf.mxu0
  %v5829 = vadd.f32 0.0, %v5828
  %5830 = vmatmul.bf16.gmra.mxu0 %v4982
  %v5831 = vpop.f32.mrf.mxu0
  %v5832 = vadd.f32 0.0, %v5831
  %v5833 = vpop.f32.mrf.mxu0
  %v5834 = vadd.f32 0.0, %v5833
  %5835 = vmatmul.bf16.gmra.mxu0 %v4985
  %v5836 = vpop.f32.mrf.mxu0
  %v5837 = vadd.f32 0.0, %v5836
  %v5838 = vpop.f32.mrf.mxu0
  %v5839 = vadd.f32 0.0, %v5838
  %5840 = vmatmul.bf16.gmra.mxu0 %v4988
  %v5841 = vpop.f32.mrf.mxu0
  %v5842 = vadd.f32 0.0, %v5841
  %v5843 = vpop.f32.mrf.mxu0
  %v5844 = vadd.f32 0.0, %v5843
  %5845 = vmatmul.bf16.gmra.mxu0 %v4991
  %v5846 = vpop.f32.mrf.mxu0
  %v5847 = vadd.f32 0.0, %v5846
  %v5848 = vpop.f32.mrf.mxu0
  %v5849 = vadd.f32 0.0, %v5848
  %5850 = vmatmul.bf16.gmra.mxu0 %v4994
  %v5851 = vpop.f32.mrf.mxu0
  %v5852 = vadd.f32 0.0, %v5851
  %v5853 = vpop.f32.mrf.mxu0
  %v5854 = vadd.f32 0.0, %v5853
  %5855 = vmatmul.bf16.gmra.mxu0 %v4997
  %v5856 = vpop.f32.mrf.mxu0
  %v5857 = vadd.f32 0.0, %v5856
  %v5858 = vpop.f32.mrf.mxu0
  %v5859 = vadd.f32 0.0, %v5858
  %5860 = vmatmul.bf16.gmra.mxu0 %v5000
  %v5861 = vpop.f32.mrf.mxu0
  %v5862 = vadd.f32 0.0, %v5861
  %v5863 = vpop.f32.mrf.mxu0
  %v5864 = vadd.f32 0.0, %v5863
  %5865 = vmatmul.bf16.gmra.mxu0 %v5003
  %v5866 = vpop.f32.mrf.mxu0
  %v5867 = vadd.f32 0.0, %v5866
  %v5868 = vpop.f32.mrf.mxu0
  %v5869 = vadd.f32 0.0, %v5868
  %5870 = vmatmul.bf16.gmra.mxu0 %v5006
  %v5871 = vpop.f32.mrf.mxu0
  %v5872 = vadd.f32 0.0, %v5871
  %v5873 = vpop.f32.mrf.mxu0
  %v5874 = vadd.f32 0.0, %v5873
  %5875 = vmatmul.bf16.gmra.mxu0 %v5009
  %v5876 = vpop.f32.mrf.mxu0
  %v5877 = vadd.f32 0.0, %v5876
  %v5878 = vpop.f32.mrf.mxu0
  %v5879 = vadd.f32 0.0, %v5878
  %5880 = vmatmul.bf16.gmra.mxu0 %v5012
  %v5881 = vpop.f32.mrf.mxu0
  %v5882 = vadd.f32 0.0, %v5881
  %v5883 = vpop.f32.mrf.mxu0
  %v5884 = vadd.f32 0.0, %v5883
  %5885 = vmatmul.bf16.gmra.mxu0 %v5015
  %v5886 = vpop.f32.mrf.mxu0
  %v5887 = vadd.f32 0.0, %v5886
  %v5888 = vpop.f32.mrf.mxu0
  %v5889 = vadd.f32 0.0, %v5888
  %5890 = vmatmul.bf16.gmra.mxu0 %v5018
  %v5891 = vpop.f32.mrf.mxu0
  %v5892 = vadd.f32 0.0, %v5891
  %v5893 = vpop.f32.mrf.mxu0
  %v5894 = vadd.f32 0.0, %v5893
  %5895 = vmatmul.bf16.gmra.mxu0 %v5021
  %v5896 = vpop.f32.mrf.mxu0
  %v5897 = vadd.f32 0.0, %v5896
  %v5898 = vpop.f32.mrf.mxu0
  %v5899 = vadd.f32 0.0, %v5898
  %5900 = vmatmul.bf16.gmra.mxu0 %v5024
  %v5901 = vpop.f32.mrf.mxu0
  %v5902 = vadd.f32 0.0, %v5901
  %v5903 = vpop.f32.mrf.mxu0
  %v5904 = vadd.f32 0.0, %v5903
  %5905 = vmatmul.bf16.gmra.mxu0 %v5027
  %v5906 = vpop.f32.mrf.mxu0
  %v5907 = vadd.f32 0.0, %v5906
  %v5908 = vpop.f32.mrf.mxu0
  %v5909 = vadd.f32 0.0, %v5908
  %5910 = vmatmul.bf16.gmra.mxu0 %v5030
  %v5911 = vpop.f32.mrf.mxu0
  %v5912 = vadd.f32 0.0, %v5911
  %v5913 = vpop.f32.mrf.mxu0
  %v5914 = vadd.f32 0.0, %v5913
  %5915 = vmatmul.bf16.gmra.mxu0 %v5734
  %v5916 = vpop.f32.mrf.mxu0
  %v5917 = vadd.f32 0.0, %v5916
  %v5918 = vpop.f32.mrf.mxu0
  %v5919 = vadd.f32 0.0, %v5918
  %5920 = vmatmul.bf16.gmra.mxu0 %v5737
  %v5921 = vpop.f32.mrf.mxu0
  %v5922 = vadd.f32 0.0, %v5921
  %v5923 = vpop.f32.mrf.mxu0
  %v5924 = vadd.f32 0.0, %v5923
  %5925 = vmatmul.bf16.gmra.mxu0 %v5740
  %v5926 = vpop.f32.mrf.mxu0
  %v5927 = vadd.f32 0.0, %v5926
  %v5928 = vpop.f32.mrf.mxu0
  %v5929 = vadd.f32 0.0, %v5928
  %5930 = vdwg.mxu0
  %v5931 = vadd.f32 %v5642, %v5752
  %v5932 = vadd.f32 %v5643, %v5754
  %v5933 = vadd.f32 %v5644, %v5757
  %v5934 = vadd.f32 %v5645, %v5759
  %v5935 = vadd.f32 %v5646, %v5762
  %v5936 = vadd.f32 %v5647, %v5764
  %v5937 = vadd.f32 %v5648, %v5767
  %v5938 = vadd.f32 %v5649, %v5769
  %v5939 = vadd.f32 %v5650, %v5772
  %v5940 = vadd.f32 %v5651, %v5774
  %v5941 = vadd.f32 %v5652, %v5777
  %v5942 = vadd.f32 %v5653, %v5779
  %v5943 = vadd.f32 %v5654, %v5782
  %v5944 = vadd.f32 %v5655, %v5784
  %v5945 = vadd.f32 %v5656, %v5787
  %v5946 = vadd.f32 %v5657, %v5789
  %v5947 = vadd.f32 %v5658, %v5792
  %v5948 = vadd.f32 %v5659, %v5794
  %v5949 = vadd.f32 %v5660, %v5797
  %v5950 = vadd.f32 %v5661, %v5799
  %v5951 = vadd.f32 %v5662, %v5802
  %v5952 = vadd.f32 %v5663, %v5804
  %v5953 = vadd.f32 %v5664, %v5807
  %v5954 = vadd.f32 %v5665, %v5809
  %v5955 = vadd.f32 %v5666, %v5812
  %v5956 = vadd.f32 %v5667, %v5814
  %v5957 = vadd.f32 %v5668, %v5817
  %v5958 = vadd.f32 %v5669, %v5819
  %v5959 = vadd.f32 %v5670, %v5822
  %v5960 = vadd.f32 %v5671, %v5824
  %v5961 = vadd.f32 %v5672, %v5827
  %v5962 = vadd.f32 %v5673, %v5829
  %v5963 = vadd.f32 %v5674, %v5832
  %v5964 = vadd.f32 %v5675, %v5834
  %v5965 = vadd.f32 %v5676, %v5837
  %v5966 = vadd.f32 %v5677, %v5839
  %v5967 = vadd.f32 %v5678, %v5842
  %v5968 = vadd.f32 %v5679, %v5844
  %v5969 = vadd.f32 %v5680, %v5847
  %v5970 = vadd.f32 %v5681, %v5849
  %v5971 = vadd.f32 %v5682, %v5852
  %v5972 = vadd.f32 %v5683, %v5854
  %v5973 = vadd.f32 %v5684, %v5857
  %v5974 = vadd.f32 %v5685, %v5859
  %v5975 = vadd.f32 %v5686, %v5862
  %v5976 = vadd.f32 %v5687, %v5864
  %v5977 = vadd.f32 %v5688, %v5867
  %v5978 = vadd.f32 %v5689, %v5869
  %v5979 = vadd.f32 %v5690, %v5872
  %v5980 = vadd.f32 %v5691, %v5874
  %v5981 = vadd.f32 %v5692, %v5877
  %v5982 = vadd.f32 %v5693, %v5879
  %v5983 = vadd.f32 %v5694, %v5882
  %v5984 = vadd.f32 %v5695, %v5884
  %v5985 = vadd.f32 %v5696, %v5887
  %v5986 = vadd.f32 %v5697, %v5889
  %v5987 = vadd.f32 %v5698, %v5892
  %v5988 = vadd.f32 %v5699, %v5894
  %v5989 = vadd.f32 %v5700, %v5897
  %v5990 = vadd.f32 %v5701, %v5899
  %v5991 = vadd.f32 %v5702, %v5902
  %v5992 = vadd.f32 %v5703, %v5904
  %v5993 = vadd.f32 %v5704, %v5907
  %v5994 = vadd.f32 %v5705, %v5909
  %v5995 = vadd.f32 %v5706, %v5912
  %v5996 = vadd.f32 %v5707, %v5914
  %v5997 = vadd.f32 %v5708, %v5917
  %v5998 = vadd.f32 %v5709, %v5919
  %v5999 = vadd.f32 %v5710, %v5922
  %v6000 = vadd.f32 %v5711, %v5924
  %v6001 = vadd.f32 %v5712, %v5927
  %v6002 = vadd.f32 %v5713, %v5929
  %v6003 = vld [vmem:[%s3728 + $0x2] sm:$0xff]
  %v6004 = vld [vmem:[%s3728 + $0xa] sm:$0xff]
  %v6005 = vld [vmem:[%s3728 + $0x12] sm:$0xff]
  %v6006 = vld [vmem:[%s3728 + $0x22] sm:$0xff]
  %v6007 = vld [vmem:[%s3728 + $0x2a] sm:$0xff]
  %v6008 = vld [vmem:[%s3728 + $0x32] sm:$0xff]
  %v6009 = vld [vmem:[%s3728 + $0x42] sm:$0xff]
  %v6010 = vld [vmem:[%s3728 + $0x4a] sm:$0xff]
  %v6011 = vld [vmem:[%s3728 + $0x52] sm:$0xff]
  %v6012 = vld [vmem:[%s3728 + $0x62] sm:$0xff]
  %v6013 = vld [vmem:[%s3728 + $0x6a] sm:$0xff]
  %v6014 = vld [vmem:[%s3728 + $0x72] sm:$0xff]
  %v6015 = vld [vmem:[%s3728 + $0x82] sm:$0xff]
  %v6016 = vld [vmem:[%s3728 + $0x8a] sm:$0xff]
  %v6017 = vld [vmem:[%s3728 + $0x92] sm:$0xff]
  %v6018 = vld [vmem:[%s3728 + $0xa2] sm:$0xff]
  %v6019 = vld [vmem:[%s3728 + $0xaa] sm:$0xff]
  %v6020 = vld [vmem:[%s3728 + $0xb2] sm:$0xff]
  %v6021 = vld [vmem:[%s3728 + $0xc2] sm:$0xff]
  %v6022 = vld [vmem:[%s3728 + $0xca] sm:$0xff]
  %v6023 = vld [vmem:[%s3728 + $0xd2] sm:$0xff]
  %v6024 = vld [vmem:[%s3728 + $0xe2] sm:$0xff]
  %v6025 = vld [vmem:[%s3728 + $0xea] sm:$0xff]
  %v6026 = vld [vmem:[%s3728 + $0xf2] sm:$0xff]
  %v6027 = vld [vmem:[%s3728 + $0x102] sm:$0xff]
  %v6028 = vld [vmem:[%s3728 + $0x10a] sm:$0xff]
  %v6029 = vld [vmem:[%s3728 + $0x112] sm:$0xff]
  %v6030 = vld [vmem:[%s3728 + $0x122] sm:$0xff]
  %v6031 = vld [vmem:[%s3728 + $0x12a] sm:$0xff]
  %v6032 = vld [vmem:[%s3728 + $0x132] sm:$0xff]
  %v6033 = vld [vmem:[%s3728 + $0x142] sm:$0xff]
  %v6034 = vld [vmem:[%s3728 + $0x14a] sm:$0xff]
  %v6035 = vld [vmem:[%s3728 + $0x152] sm:$0xff]
  %v6036 = vld [vmem:[%s3728 + $0x162] sm:$0xff]
  %v6037 = vld [vmem:[%s3728 + $0x16a] sm:$0xff]
  %v6038 = vld [vmem:[%s3728 + $0x172] sm:$0xff]
  %v6039 = vld [vmem:[%s3728 + $0x182] sm:$0xff]
  %v6040 = vld [vmem:[%s3728 + $0x18a] sm:$0xff]
  %v6041 = vld [vmem:[%s3728 + $0x192] sm:$0xff]
  %v6042 = vld [vmem:[%s3728 + $0x1a2] sm:$0xff]
  %v6043 = vld [vmem:[%s3728 + $0x1aa] sm:$0xff]
  %v6044 = vld [vmem:[%s3728 + $0x1b2] sm:$0xff]
  %v6045 = vld [vmem:[%s3728 + $0x1c2] sm:$0xff]
  %v6046 = vld [vmem:[%s3728 + $0x1ca] sm:$0xff]
  %v6047 = vld [vmem:[%s3728 + $0x1d2] sm:$0xff]
  %v6048 = vld [vmem:[%s3728 + $0x1e2] sm:$0xff]
  %v6049 = vld [vmem:[%s3728 + $0x1ea] sm:$0xff]
  %v6050 = vld [vmem:[%s3728 + $0x1f2] sm:$0xff]
  %v6051 = vld [vmem:[%s3728 + $0x202] sm:$0xff]
  %v6052 = vld [vmem:[%s3728 + $0x20a] sm:$0xff]
  %v6053 = vld [vmem:[%s3728 + $0x212] sm:$0xff]
  %v6054 = vld [vmem:[%s3728 + $0x222] sm:$0xff]
  %v6055 = vld [vmem:[%s3728 + $0x22a] sm:$0xff]
  %v6056 = vld [vmem:[%s3728 + $0x232] sm:$0xff]
  %v6057 = vld [vmem:[%s3728 + $0x242] sm:$0xff]
  %v6058 = vld [vmem:[%s3728 + $0x24a] sm:$0xff]
  %v6059 = vld [vmem:[%s3728 + $0x252] sm:$0xff]
  %v6060 = vld [vmem:[%s3728 + $0x262] sm:$0xff]
  %v6061 = vld [vmem:[%s3728 + $0x26a] sm:$0xff]
  %v6062 = vld [vmem:[%s3728 + $0x272] sm:$0xff]
  %v6063 = vld [vmem:[%s3728 + $0x282] sm:$0xff]
  %v6064 = vld [vmem:[%s3728 + $0x28a] sm:$0xff]
  %v6065 = vld [vmem:[%s3728 + $0x292] sm:$0xff]
  %v6066 = vld [vmem:[%s3728 + $0x2a2] sm:$0xff]
  %v6067 = vld [vmem:[%s3728 + $0x2aa] sm:$0xff]
  %v6068 = vld [vmem:[%s3728 + $0x2b2] sm:$0xff]
  %v6069 = vld [vmem:[%s3728 + $0x2c2] sm:$0xff]
  %v6070 = vld [vmem:[%s3728 + $0x2ca] sm:$0xff]
  %v6071 = vld [vmem:[%s3728 + $0x2d2] sm:$0xff]
  %v6072 = vld [vmem:[%s3728 + $0x2e2] sm:$0xff]
  %v6073 = vld [vmem:[%s3728 + $0x2ea] sm:$0xff]
  %v6074 = vld [vmem:[%s3728 + $0x2f2] sm:$0xff]
  %v6075 = vld [vmem:[%s3728 + $0x302] sm:$0xff]
  %v6076 = vld [vmem:[%s3728 + $0x30a] sm:$0xff]
  %v6077 = vld [vmem:[%s3728 + $0x312] sm:$0xff]
  %v6078 = vld [vmem:[%s3728 + $0x322] sm:$0xff]
  %v6079 = vld [vmem:[%s3728 + $0x32a] sm:$0xff]
  %v6080 = vld [vmem:[%s3728 + $0x332] sm:$0xff]
  %v6081 = vpack.c.bf16 %v6004, %v6003
  %v6082 = vpack.c.bf16 %v6006, %v6005
  %v6083 = vpack.c.bf16 %v6008, %v6007
  %v6084 = vpack.c.bf16 %v6010, %v6009
  %v6085 = vpack.c.bf16 %v6012, %v6011
  %v6086 = vpack.c.bf16 %v6014, %v6013
  %v6087 = vpack.c.bf16 %v6016, %v6015
  %v6088 = vpack.c.bf16 %v6018, %v6017
  %v6089 = vpack.c.bf16 %v6020, %v6019
  %v6090 = vpack.c.bf16 %v6022, %v6021
  %v6091 = vpack.c.bf16 %v6024, %v6023
  %v6092 = vpack.c.bf16 %v6026, %v6025
  %v6093 = vpack.c.bf16 %v6028, %v6027
  %v6094 = vpack.c.bf16 %v6030, %v6029
  %v6095 = vpack.c.bf16 %v6032, %v6031
  %v6096 = vpack.c.bf16 %v6034, %v6033
  %v6097 = vpack.c.bf16 %v6036, %v6035
  %v6098 = vpack.c.bf16 %v6038, %v6037
  %v6099 = vpack.c.bf16 %v6040, %v6039
  %v6100 = vpack.c.bf16 %v6042, %v6041
  %v6101 = vpack.c.bf16 %v6044, %v6043
  %v6102 = vpack.c.bf16 %v6046, %v6045
  %v6103 = vpack.c.bf16 %v6048, %v6047
  %v6104 = vpack.c.bf16 %v6050, %v6049
  %v6105 = vpack.c.bf16 %v6052, %v6051
  %v6106 = vpack.c.bf16 %v6054, %v6053
  %v6107 = vpack.c.bf16 %v6056, %v6055
  %v6108 = vpack.c.bf16 %v6058, %v6057
  %v6109 = vpack.c.bf16 %v6060, %v6059
  %v6110 = vpack.c.bf16 %v6062, %v6061
  %v6111 = vpack.c.bf16 %v6064, %v6063
  %v6112 = vpack.c.bf16 %v6066, %v6065
  %v6113 = vpack.c.bf16 %v6068, %v6067
  %v6114 = vpack.c.bf16 %v6070, %v6069
  %v6115 = vpack.c.bf16 %v6072, %v6071
  %v6116 = vpack.c.bf16 %v6074, %v6073
  %v6117 = vld [vmem:[%s2409] sm:$0xf]
  %v6118 = vld [vmem:[%s2409 + $0x4] sm:$0xf]
  %v6119 = vld [vmem:[%s2409 + $0x8] sm:$0xf]
  %v6120 = vld [vmem:[%s2409 + $0xc] sm:$0xf]
  %v6125 = vunpack.c.l.b16 %v6117
  %v6126 = vunpack.c.l.b16 %v6118
  %v6127 = vunpack.c.l.b16 %v6119
  %v6128 = vunpack.c.l.b16 %v6120
  %v6129 = vpack.c.b16 %v6126, %v6125
  %v6130 = vpack.c.b16 %v6128, %v6127
  %v6134 = vsel %vm186, %v6081, 0
  %v6137 = vsel %vm186, %v6082, 0
  %v6140 = vsel %vm186, %v6083, 0
  %v6143 = vsel %vm186, %v6084, 0
  %v6146 = vsel %vm186, %v6085, 0
  %v6149 = vsel %vm186, %v6086, 0
  %v6152 = vsel %vm186, %v6087, 0
  %v6155 = vsel %vm186, %v6088, 0
  %v6158 = vsel %vm186, %v6089, 0
  %v6161 = vsel %vm186, %v6090, 0
  %v6164 = vsel %vm186, %v6091, 0
  %v6167 = vsel %vm186, %v6092, 0
  %v6170 = vsel %vm186, %v6093, 0
  %v6173 = vsel %vm186, %v6094, 0
  %v6176 = vsel %vm186, %v6095, 0
  %v6179 = vsel %vm186, %v6096, 0
  %v6182 = vsel %vm186, %v6097, 0
  %v6185 = vsel %vm186, %v6098, 0
  %v6188 = vsel %vm186, %v6099, 0
  %v6191 = vsel %vm186, %v6100, 0
  %v6194 = vsel %vm186, %v6101, 0
  %v6197 = vsel %vm186, %v6102, 0
  %v6200 = vsel %vm186, %v6103, 0
  %v6203 = vsel %vm186, %v6104, 0
  %v6206 = vsel %vm186, %v6105, 0
  %v6209 = vsel %vm186, %v6106, 0
  %v6212 = vsel %vm186, %v6107, 0
  %v6215 = vsel %vm186, %v6108, 0
  %v6218 = vsel %vm186, %v6109, 0
  %v6221 = vsel %vm186, %v6110, 0
  %v6224 = vsel %vm186, %v6111, 0
  %v6227 = vsel %vm186, %v6112, 0
  %v6230 = vsel %vm186, %v6113, 0
  %v6233 = vsel %vm186, %v6114, 0
  %v6236 = vsel %vm186, %v6115, 0
  %v6239 = vsel %vm186, %v6116, 0
  %6241 = vmatpush.bf16.msra.mxu0 0
  %6242 = vmatpush.bf16.msra.mxu0 0
  %6243 = vmatpush.bf16.msra.mxu0 0
  %6244 = vmatpush.bf16.msra.mxu0 0
  %6245 = vmatpush.bf16.msra.mxu0 0
  %6246 = vmatpush.bf16.msra.mxu0 0
  %6247 = vmatpush.bf16.msra.mxu0 %v6130
  %6248 = vmatpush.bf16.msra.mxu0 %v6129
  %6249 = vmatmul.bf16.gmra.mxu0 %v6134
  %v6250 = vpop.f32.mrf.mxu0
  %v6251 = vadd.f32 0.0, %v6250
  %v6252 = vpop.f32.mrf.mxu0
  %v6253 = vadd.f32 0.0, %v6252
  %6254 = vmatmul.bf16.gmra.mxu0 %v6137
  %v6255 = vpop.f32.mrf.mxu0
  %v6256 = vadd.f32 0.0, %v6255
  %v6257 = vpop.f32.mrf.mxu0
  %v6258 = vadd.f32 0.0, %v6257
  %6259 = vmatmul.bf16.gmra.mxu0 %v6140
  %v6260 = vpop.f32.mrf.mxu0
  %v6261 = vadd.f32 0.0, %v6260
  %v6262 = vpop.f32.mrf.mxu0
  %v6263 = vadd.f32 0.0, %v6262
  %6264 = vmatmul.bf16.gmra.mxu0 %v6143
  %v6265 = vpop.f32.mrf.mxu0
  %v6266 = vadd.f32 0.0, %v6265
  %v6267 = vpop.f32.mrf.mxu0
  %v6268 = vadd.f32 0.0, %v6267
  %6269 = vmatmul.bf16.gmra.mxu0 %v6146
  %v6270 = vpop.f32.mrf.mxu0
  %v6271 = vadd.f32 0.0, %v6270
  %v6272 = vpop.f32.mrf.mxu0
  %v6273 = vadd.f32 0.0, %v6272
  %6274 = vmatmul.bf16.gmra.mxu0 %v6149
  %v6275 = vpop.f32.mrf.mxu0
  %v6276 = vadd.f32 0.0, %v6275
  %v6277 = vpop.f32.mrf.mxu0
  %v6278 = vadd.f32 0.0, %v6277
  %6279 = vmatmul.bf16.gmra.mxu0 %v6152
  %v6280 = vpop.f32.mrf.mxu0
  %v6281 = vadd.f32 0.0, %v6280
  %v6282 = vpop.f32.mrf.mxu0
  %v6283 = vadd.f32 0.0, %v6282
  %6284 = vmatmul.bf16.gmra.mxu0 %v6155
  %v6285 = vpop.f32.mrf.mxu0
  %v6286 = vadd.f32 0.0, %v6285
  %v6287 = vpop.f32.mrf.mxu0
  %v6288 = vadd.f32 0.0, %v6287
  %6289 = vmatmul.bf16.gmra.mxu0 %v6158
  %v6290 = vpop.f32.mrf.mxu0
  %v6291 = vadd.f32 0.0, %v6290
  %v6292 = vpop.f32.mrf.mxu0
  %v6293 = vadd.f32 0.0, %v6292
  %6294 = vmatmul.bf16.gmra.mxu0 %v6161
  %v6295 = vpop.f32.mrf.mxu0
  %v6296 = vadd.f32 0.0, %v6295
  %v6297 = vpop.f32.mrf.mxu0
  %v6298 = vadd.f32 0.0, %v6297
  %6299 = vmatmul.bf16.gmra.mxu0 %v6164
  %v6300 = vpop.f32.mrf.mxu0
  %v6301 = vadd.f32 0.0, %v6300
  %v6302 = vpop.f32.mrf.mxu0
  %v6303 = vadd.f32 0.0, %v6302
  %6304 = vmatmul.bf16.gmra.mxu0 %v6167
  %v6305 = vpop.f32.mrf.mxu0
  %v6306 = vadd.f32 0.0, %v6305
  %v6307 = vpop.f32.mrf.mxu0
  %v6308 = vadd.f32 0.0, %v6307
  %6309 = vmatmul.bf16.gmra.mxu0 %v6170
  %v6310 = vpop.f32.mrf.mxu0
  %v6311 = vadd.f32 0.0, %v6310
  %v6312 = vpop.f32.mrf.mxu0
  %v6313 = vadd.f32 0.0, %v6312
  %6314 = vmatmul.bf16.gmra.mxu0 %v6173
  %v6315 = vpop.f32.mrf.mxu0
  %v6316 = vadd.f32 0.0, %v6315
  %v6317 = vpop.f32.mrf.mxu0
  %v6318 = vadd.f32 0.0, %v6317
  %6319 = vmatmul.bf16.gmra.mxu0 %v6176
  %v6320 = vpop.f32.mrf.mxu0
  %v6321 = vadd.f32 0.0, %v6320
  %v6322 = vpop.f32.mrf.mxu0
  %v6323 = vadd.f32 0.0, %v6322
  %6324 = vmatmul.bf16.gmra.mxu0 %v6179
  %v6325 = vpop.f32.mrf.mxu0
  %v6326 = vadd.f32 0.0, %v6325
  %v6327 = vpop.f32.mrf.mxu0
  %v6328 = vadd.f32 0.0, %v6327
  %6329 = vmatmul.bf16.gmra.mxu0 %v6182
  %v6330 = vpop.f32.mrf.mxu0
  %v6331 = vadd.f32 0.0, %v6330
  %v6332 = vpop.f32.mrf.mxu0
  %v6333 = vadd.f32 0.0, %v6332
  %6334 = vmatmul.bf16.gmra.mxu0 %v6185
  %v6335 = vpop.f32.mrf.mxu0
  %v6336 = vadd.f32 0.0, %v6335
  %v6337 = vpop.f32.mrf.mxu0
  %v6338 = vadd.f32 0.0, %v6337
  %6339 = vmatmul.bf16.gmra.mxu0 %v6188
  %v6340 = vpop.f32.mrf.mxu0
  %v6341 = vadd.f32 0.0, %v6340
  %v6342 = vpop.f32.mrf.mxu0
  %v6343 = vadd.f32 0.0, %v6342
  %6344 = vmatmul.bf16.gmra.mxu0 %v6191
  %v6345 = vpop.f32.mrf.mxu0
  %v6346 = vadd.f32 0.0, %v6345
  %v6347 = vpop.f32.mrf.mxu0
  %v6348 = vadd.f32 0.0, %v6347
  %6349 = vmatmul.bf16.gmra.mxu0 %v6194
  %v6350 = vpop.f32.mrf.mxu0
  %v6351 = vadd.f32 0.0, %v6350
  %v6352 = vpop.f32.mrf.mxu0
  %v6353 = vadd.f32 0.0, %v6352
  %6354 = vmatmul.bf16.gmra.mxu0 %v6197
  %v6355 = vpop.f32.mrf.mxu0
  %v6356 = vadd.f32 0.0, %v6355
  %v6357 = vpop.f32.mrf.mxu0
  %v6358 = vadd.f32 0.0, %v6357
  %6359 = vmatmul.bf16.gmra.mxu0 %v6200
  %v6360 = vpop.f32.mrf.mxu0
  %v6361 = vadd.f32 0.0, %v6360
  %v6362 = vpop.f32.mrf.mxu0
  %v6363 = vadd.f32 0.0, %v6362
  %6364 = vmatmul.bf16.gmra.mxu0 %v6203
  %v6365 = vpop.f32.mrf.mxu0
  %v6366 = vadd.f32 0.0, %v6365
  %v6367 = vpop.f32.mrf.mxu0
  %v6368 = vadd.f32 0.0, %v6367
  %6369 = vmatmul.bf16.gmra.mxu0 %v6206
  %v6370 = vpop.f32.mrf.mxu0
  %v6371 = vadd.f32 0.0, %v6370
  %v6372 = vpop.f32.mrf.mxu0
  %v6373 = vadd.f32 0.0, %v6372
  %6374 = vmatmul.bf16.gmra.mxu0 %v6209
  %v6375 = vpop.f32.mrf.mxu0
  %v6376 = vadd.f32 0.0, %v6375
  %v6377 = vpop.f32.mrf.mxu0
  %v6378 = vadd.f32 0.0, %v6377
  %6379 = vmatmul.bf16.gmra.mxu0 %v6212
  %v6380 = vpop.f32.mrf.mxu0
  %v6381 = vadd.f32 0.0, %v6380
  %v6382 = vpop.f32.mrf.mxu0
  %v6383 = vadd.f32 0.0, %v6382
  %6384 = vmatmul.bf16.gmra.mxu0 %v6215
  %v6385 = vpop.f32.mrf.mxu0
  %v6386 = vadd.f32 0.0, %v6385
  %v6387 = vpop.f32.mrf.mxu0
  %v6388 = vadd.f32 0.0, %v6387
  %6389 = vmatmul.bf16.gmra.mxu0 %v6218
  %v6390 = vpop.f32.mrf.mxu0
  %v6391 = vadd.f32 0.0, %v6390
  %v6392 = vpop.f32.mrf.mxu0
  %v6393 = vadd.f32 0.0, %v6392
  %6394 = vmatmul.bf16.gmra.mxu0 %v6221
  %v6395 = vpop.f32.mrf.mxu0
  %v6396 = vadd.f32 0.0, %v6395
  %v6397 = vpop.f32.mrf.mxu0
  %v6398 = vadd.f32 0.0, %v6397
  %6399 = vmatmul.bf16.gmra.mxu0 %v6224
  %v6400 = vpop.f32.mrf.mxu0
  %v6401 = vadd.f32 0.0, %v6400
  %v6402 = vpop.f32.mrf.mxu0
  %v6403 = vadd.f32 0.0, %v6402
  %6404 = vmatmul.bf16.gmra.mxu0 %v6227
  %v6405 = vpop.f32.mrf.mxu0
  %v6406 = vadd.f32 0.0, %v6405
  %v6407 = vpop.f32.mrf.mxu0
  %v6408 = vadd.f32 0.0, %v6407
  %6409 = vmatmul.bf16.gmra.mxu0 %v6230
  %v6410 = vpop.f32.mrf.mxu0
  %v6411 = vadd.f32 0.0, %v6410
  %v6412 = vpop.f32.mrf.mxu0
  %v6413 = vadd.f32 0.0, %v6412
  %6414 = vmatmul.bf16.gmra.mxu0 %v6233
  %v6415 = vpop.f32.mrf.mxu0
  %v6416 = vadd.f32 0.0, %v6415
  %v6417 = vpop.f32.mrf.mxu0
  %v6418 = vadd.f32 0.0, %v6417
  %6419 = vmatmul.bf16.gmra.mxu0 %v6236
  %v6420 = vpop.f32.mrf.mxu0
  %v6421 = vadd.f32 0.0, %v6420
  %v6422 = vpop.f32.mrf.mxu0
  %v6423 = vadd.f32 0.0, %v6422
  %6424 = vmatmul.bf16.gmra.mxu0 %v6239
  %v6425 = vpop.f32.mrf.mxu0
  %v6426 = vadd.f32 0.0, %v6425
  %v6427 = vpop.f32.mrf.mxu0
  %v6428 = vadd.f32 0.0, %v6427
  %6429 = vdwg.mxu0
  %v6430 = vadd.f32 %v5931, %v6251
  %v6431 = vadd.f32 %v5932, %v6253
  %v6432 = vadd.f32 %v5933, %v6256
  %v6433 = vadd.f32 %v5934, %v6258
  %v6434 = vadd.f32 %v5935, %v6261
  %v6435 = vadd.f32 %v5936, %v6263
  %v6436 = vadd.f32 %v5937, %v6266
  %v6437 = vadd.f32 %v5938, %v6268
  %v6438 = vadd.f32 %v5939, %v6271
  %v6439 = vadd.f32 %v5940, %v6273
  %v6440 = vadd.f32 %v5941, %v6276
  %v6441 = vadd.f32 %v5942, %v6278
  %v6442 = vadd.f32 %v5943, %v6281
  %v6443 = vadd.f32 %v5944, %v6283
  %v6444 = vadd.f32 %v5945, %v6286
  %v6445 = vadd.f32 %v5946, %v6288
  %v6446 = vadd.f32 %v5947, %v6291
  %v6447 = vadd.f32 %v5948, %v6293
  %v6448 = vadd.f32 %v5949, %v6296
  %v6449 = vadd.f32 %v5950, %v6298
  %v6450 = vadd.f32 %v5951, %v6301
  %v6451 = vadd.f32 %v5952, %v6303
  %v6452 = vadd.f32 %v5953, %v6306
  %v6453 = vadd.f32 %v5954, %v6308
  %v6454 = vadd.f32 %v5955, %v6311
  %v6455 = vadd.f32 %v5956, %v6313
  %v6456 = vadd.f32 %v5957, %v6316
  %v6457 = vadd.f32 %v5958, %v6318
  %v6458 = vadd.f32 %v5959, %v6321
  %v6459 = vadd.f32 %v5960, %v6323
  %v6460 = vadd.f32 %v5961, %v6326
  %v6461 = vadd.f32 %v5962, %v6328
  %v6462 = vadd.f32 %v5963, %v6331
  %v6463 = vadd.f32 %v5964, %v6333
  %v6464 = vadd.f32 %v5965, %v6336
  %v6465 = vadd.f32 %v5966, %v6338
  %v6466 = vadd.f32 %v5967, %v6341
  %v6467 = vadd.f32 %v5968, %v6343
  %v6468 = vadd.f32 %v5969, %v6346
  %v6469 = vadd.f32 %v5970, %v6348
  %v6470 = vadd.f32 %v5971, %v6351
  %v6471 = vadd.f32 %v5972, %v6353
  %v6472 = vadd.f32 %v5973, %v6356
  %v6473 = vadd.f32 %v5974, %v6358
  %v6474 = vadd.f32 %v5975, %v6361
  %v6475 = vadd.f32 %v5976, %v6363
  %v6476 = vadd.f32 %v5977, %v6366
  %v6477 = vadd.f32 %v5978, %v6368
  %v6478 = vadd.f32 %v5979, %v6371
  %v6479 = vadd.f32 %v5980, %v6373
  %v6480 = vadd.f32 %v5981, %v6376
  %v6481 = vadd.f32 %v5982, %v6378
  %v6482 = vadd.f32 %v5983, %v6381
  %v6483 = vadd.f32 %v5984, %v6383
  %v6484 = vadd.f32 %v5985, %v6386
  %v6485 = vadd.f32 %v5986, %v6388
  %v6486 = vadd.f32 %v5987, %v6391
  %v6487 = vadd.f32 %v5988, %v6393
  %v6488 = vadd.f32 %v5989, %v6396
  %v6489 = vadd.f32 %v5990, %v6398
  %v6490 = vadd.f32 %v5991, %v6401
  %v6491 = vadd.f32 %v5992, %v6403
  %v6492 = vadd.f32 %v5993, %v6406
  %v6493 = vadd.f32 %v5994, %v6408
  %v6494 = vadd.f32 %v5995, %v6411
  %v6495 = vadd.f32 %v5996, %v6413
  %v6496 = vadd.f32 %v5997, %v6416
  %v6497 = vadd.f32 %v5998, %v6418
  %v6498 = vadd.f32 %v5999, %v6421
  %v6499 = vadd.f32 %v6000, %v6423
  %v6500 = vadd.f32 %v6001, %v6426
  %v6501 = vadd.f32 %v6002, %v6428
  %v6502 = vpack.c.bf16 %v6007, %v6006
  %v6503 = vpack.c.bf16 %v6009, %v6008
  %v6504 = vpack.c.bf16 %v6011, %v6010
  %v6505 = vpack.c.bf16 %v6013, %v6012
  %v6506 = vpack.c.bf16 %v6015, %v6014
  %v6507 = vpack.c.bf16 %v6017, %v6016
  %v6508 = vpack.c.bf16 %v6019, %v6018
  %v6509 = vpack.c.bf16 %v6021, %v6020
  %v6510 = vpack.c.bf16 %v6023, %v6022
  %v6511 = vpack.c.bf16 %v6025, %v6024
  %v6512 = vpack.c.bf16 %v6027, %v6026
  %v6513 = vpack.c.bf16 %v6029, %v6028
  %v6514 = vpack.c.bf16 %v6031, %v6030
  %v6515 = vpack.c.bf16 %v6033, %v6032
  %v6516 = vpack.c.bf16 %v6035, %v6034
  %v6517 = vpack.c.bf16 %v6037, %v6036
  %v6518 = vpack.c.bf16 %v6039, %v6038
  %v6519 = vpack.c.bf16 %v6041, %v6040
  %v6520 = vpack.c.bf16 %v6043, %v6042
  %v6521 = vpack.c.bf16 %v6045, %v6044
  %v6522 = vpack.c.bf16 %v6047, %v6046
  %v6523 = vpack.c.bf16 %v6049, %v6048
  %v6524 = vpack.c.bf16 %v6051, %v6050
  %v6525 = vpack.c.bf16 %v6053, %v6052
  %v6526 = vpack.c.bf16 %v6055, %v6054
  %v6527 = vpack.c.bf16 %v6057, %v6056
  %v6528 = vpack.c.bf16 %v6059, %v6058
  %v6529 = vpack.c.bf16 %v6061, %v6060
  %v6530 = vpack.c.bf16 %v6063, %v6062
  %v6531 = vpack.c.bf16 %v6065, %v6064
  %v6532 = vpack.c.bf16 %v6067, %v6066
  %v6533 = vpack.c.bf16 %v6069, %v6068
  %v6534 = vpack.c.bf16 %v6071, %v6070
  %v6535 = vpack.c.bf16 %v6073, %v6072
  %v6536 = vpack.c.bf16 %v6075, %v6074
  %v6537 = vpack.c.bf16 %v6077, %v6076
  %v6538 = vld [vmem:[%s2831] sm:$0xf]
  %v6539 = vld [vmem:[%s2831 + $0x4] sm:$0xf]
  %v6540 = vld [vmem:[%s2831 + $0x8] sm:$0xf]
  %v6541 = vld [vmem:[%s2831 + $0xc] sm:$0xf]
  %v6546 = vunpack.c.l.b16 %v6538
  %v6547 = vunpack.c.l.b16 %v6539
  %v6548 = vunpack.c.l.b16 %v6540
  %v6549 = vunpack.c.l.b16 %v6541
  %v6550 = vpack.c.b16 %v6547, %v6546
  %v6551 = vpack.c.b16 %v6549, %v6548
  %v6555 = vsel %vm186, %v6502, 0
  %v6558 = vsel %vm186, %v6503, 0
  %v6561 = vsel %vm186, %v6504, 0
  %v6564 = vsel %vm186, %v6505, 0
  %v6567 = vsel %vm186, %v6506, 0
  %v6570 = vsel %vm186, %v6507, 0
  %v6573 = vsel %vm186, %v6508, 0
  %v6576 = vsel %vm186, %v6509, 0
  %v6579 = vsel %vm186, %v6510, 0
  %v6582 = vsel %vm186, %v6511, 0
  %v6585 = vsel %vm186, %v6512, 0
  %v6588 = vsel %vm186, %v6513, 0
  %v6591 = vsel %vm186, %v6514, 0
  %v6594 = vsel %vm186, %v6515, 0
  %v6597 = vsel %vm186, %v6516, 0
  %v6600 = vsel %vm186, %v6517, 0
  %v6603 = vsel %vm186, %v6518, 0
  %v6606 = vsel %vm186, %v6519, 0
  %v6609 = vsel %vm186, %v6520, 0
  %v6612 = vsel %vm186, %v6521, 0
  %v6615 = vsel %vm186, %v6522, 0
  %v6618 = vsel %vm186, %v6523, 0
  %v6621 = vsel %vm186, %v6524, 0
  %v6624 = vsel %vm186, %v6525, 0
  %v6627 = vsel %vm186, %v6526, 0
  %v6630 = vsel %vm186, %v6527, 0
  %v6633 = vsel %vm186, %v6528, 0
  %v6636 = vsel %vm186, %v6529, 0
  %v6639 = vsel %vm186, %v6530, 0
  %v6642 = vsel %vm186, %v6531, 0
  %v6645 = vsel %vm186, %v6532, 0
  %v6648 = vsel %vm186, %v6533, 0
  %v6651 = vsel %vm186, %v6534, 0
  %v6654 = vsel %vm186, %v6535, 0
  %v6657 = vsel %vm186, %v6536, 0
  %v6660 = vsel %vm186, %v6537, 0
  %6662 = vmatpush.bf16.msra.mxu0 0
  %6663 = vmatpush.bf16.msra.mxu0 0
  %6664 = vmatpush.bf16.msra.mxu0 0
  %6665 = vmatpush.bf16.msra.mxu0 0
  %6666 = vmatpush.bf16.msra.mxu0 0
  %6667 = vmatpush.bf16.msra.mxu0 0
  %6668 = vmatpush.bf16.msra.mxu0 %v6551
  %6669 = vmatpush.bf16.msra.mxu0 %v6550
  %6670 = vmatmul.bf16.gmra.mxu0 %v6555
  %v6671 = vpop.f32.mrf.mxu0
  %v6672 = vadd.f32 0.0, %v6671
  %v6673 = vpop.f32.mrf.mxu0
  %v6674 = vadd.f32 0.0, %v6673
  %6675 = vmatmul.bf16.gmra.mxu0 %v6558
  %v6676 = vpop.f32.mrf.mxu0
  %v6677 = vadd.f32 0.0, %v6676
  %v6678 = vpop.f32.mrf.mxu0
  %v6679 = vadd.f32 0.0, %v6678
  %6680 = vmatmul.bf16.gmra.mxu0 %v6561
  %v6681 = vpop.f32.mrf.mxu0
  %v6682 = vadd.f32 0.0, %v6681
  %v6683 = vpop.f32.mrf.mxu0
  %v6684 = vadd.f32 0.0, %v6683
  %6685 = vmatmul.bf16.gmra.mxu0 %v6564
  %v6686 = vpop.f32.mrf.mxu0
  %v6687 = vadd.f32 0.0, %v6686
  %v6688 = vpop.f32.mrf.mxu0
  %v6689 = vadd.f32 0.0, %v6688
  %6690 = vmatmul.bf16.gmra.mxu0 %v6567
  %v6691 = vpop.f32.mrf.mxu0
  %v6692 = vadd.f32 0.0, %v6691
  %v6693 = vpop.f32.mrf.mxu0
  %v6694 = vadd.f32 0.0, %v6693
  %6695 = vmatmul.bf16.gmra.mxu0 %v6570
  %v6696 = vpop.f32.mrf.mxu0
  %v6697 = vadd.f32 0.0, %v6696
  %v6698 = vpop.f32.mrf.mxu0
  %v6699 = vadd.f32 0.0, %v6698
  %6700 = vmatmul.bf16.gmra.mxu0 %v6573
  %v6701 = vpop.f32.mrf.mxu0
  %v6702 = vadd.f32 0.0, %v6701
  %v6703 = vpop.f32.mrf.mxu0
  %v6704 = vadd.f32 0.0, %v6703
  %6705 = vmatmul.bf16.gmra.mxu0 %v6576
  %v6706 = vpop.f32.mrf.mxu0
  %v6707 = vadd.f32 0.0, %v6706
  %v6708 = vpop.f32.mrf.mxu0
  %v6709 = vadd.f32 0.0, %v6708
  %6710 = vmatmul.bf16.gmra.mxu0 %v6579
  %v6711 = vpop.f32.mrf.mxu0
  %v6712 = vadd.f32 0.0, %v6711
  %v6713 = vpop.f32.mrf.mxu0
  %v6714 = vadd.f32 0.0, %v6713
  %6715 = vmatmul.bf16.gmra.mxu0 %v6582
  %v6716 = vpop.f32.mrf.mxu0
  %v6717 = vadd.f32 0.0, %v6716
  %v6718 = vpop.f32.mrf.mxu0
  %v6719 = vadd.f32 0.0, %v6718
  %6720 = vmatmul.bf16.gmra.mxu0 %v6585
  %v6721 = vpop.f32.mrf.mxu0
  %v6722 = vadd.f32 0.0, %v6721
  %v6723 = vpop.f32.mrf.mxu0
  %v6724 = vadd.f32 0.0, %v6723
  %6725 = vmatmul.bf16.gmra.mxu0 %v6588
  %v6726 = vpop.f32.mrf.mxu0
  %v6727 = vadd.f32 0.0, %v6726
  %v6728 = vpop.f32.mrf.mxu0
  %v6729 = vadd.f32 0.0, %v6728
  %6730 = vmatmul.bf16.gmra.mxu0 %v6591
  %v6731 = vpop.f32.mrf.mxu0
  %v6732 = vadd.f32 0.0, %v6731
  %v6733 = vpop.f32.mrf.mxu0
  %v6734 = vadd.f32 0.0, %v6733
  %6735 = vmatmul.bf16.gmra.mxu0 %v6594
  %v6736 = vpop.f32.mrf.mxu0
  %v6737 = vadd.f32 0.0, %v6736
  %v6738 = vpop.f32.mrf.mxu0
  %v6739 = vadd.f32 0.0, %v6738
  %6740 = vmatmul.bf16.gmra.mxu0 %v6597
  %v6741 = vpop.f32.mrf.mxu0
  %v6742 = vadd.f32 0.0, %v6741
  %v6743 = vpop.f32.mrf.mxu0
  %v6744 = vadd.f32 0.0, %v6743
  %6745 = vmatmul.bf16.gmra.mxu0 %v6600
  %v6746 = vpop.f32.mrf.mxu0
  %v6747 = vadd.f32 0.0, %v6746
  %v6748 = vpop.f32.mrf.mxu0
  %v6749 = vadd.f32 0.0, %v6748
  %6750 = vmatmul.bf16.gmra.mxu0 %v6603
  %v6751 = vpop.f32.mrf.mxu0
  %v6752 = vadd.f32 0.0, %v6751
  %v6753 = vpop.f32.mrf.mxu0
  %v6754 = vadd.f32 0.0, %v6753
  %6755 = vmatmul.bf16.gmra.mxu0 %v6606
  %v6756 = vpop.f32.mrf.mxu0
  %v6757 = vadd.f32 0.0, %v6756
  %v6758 = vpop.f32.mrf.mxu0
  %v6759 = vadd.f32 0.0, %v6758
  %6760 = vmatmul.bf16.gmra.mxu0 %v6609
  %v6761 = vpop.f32.mrf.mxu0
  %v6762 = vadd.f32 0.0, %v6761
  %v6763 = vpop.f32.mrf.mxu0
  %v6764 = vadd.f32 0.0, %v6763
  %6765 = vmatmul.bf16.gmra.mxu0 %v6612
  %v6766 = vpop.f32.mrf.mxu0
  %v6767 = vadd.f32 0.0, %v6766
  %v6768 = vpop.f32.mrf.mxu0
  %v6769 = vadd.f32 0.0, %v6768
  %6770 = vmatmul.bf16.gmra.mxu0 %v6615
  %v6771 = vpop.f32.mrf.mxu0
  %v6772 = vadd.f32 0.0, %v6771
  %v6773 = vpop.f32.mrf.mxu0
  %v6774 = vadd.f32 0.0, %v6773
  %6775 = vmatmul.bf16.gmra.mxu0 %v6618
  %v6776 = vpop.f32.mrf.mxu0
  %v6777 = vadd.f32 0.0, %v6776
  %v6778 = vpop.f32.mrf.mxu0
  %v6779 = vadd.f32 0.0, %v6778
  %6780 = vmatmul.bf16.gmra.mxu0 %v6621
  %v6781 = vpop.f32.mrf.mxu0
  %v6782 = vadd.f32 0.0, %v6781
  %v6783 = vpop.f32.mrf.mxu0
  %v6784 = vadd.f32 0.0, %v6783
  %6785 = vmatmul.bf16.gmra.mxu0 %v6624
  %v6786 = vpop.f32.mrf.mxu0
  %v6787 = vadd.f32 0.0, %v6786
  %v6788 = vpop.f32.mrf.mxu0
  %v6789 = vadd.f32 0.0, %v6788
  %6790 = vmatmul.bf16.gmra.mxu0 %v6627
  %v6791 = vpop.f32.mrf.mxu0
  %v6792 = vadd.f32 0.0, %v6791
  %v6793 = vpop.f32.mrf.mxu0
  %v6794 = vadd.f32 0.0, %v6793
  %6795 = vmatmul.bf16.gmra.mxu0 %v6630
  %v6796 = vpop.f32.mrf.mxu0
  %v6797 = vadd.f32 0.0, %v6796
  %v6798 = vpop.f32.mrf.mxu0
  %v6799 = vadd.f32 0.0, %v6798
  %6800 = vmatmul.bf16.gmra.mxu0 %v6633
  %v6801 = vpop.f32.mrf.mxu0
  %v6802 = vadd.f32 0.0, %v6801
  %v6803 = vpop.f32.mrf.mxu0
  %v6804 = vadd.f32 0.0, %v6803
  %6805 = vmatmul.bf16.gmra.mxu0 %v6636
  %v6806 = vpop.f32.mrf.mxu0
  %v6807 = vadd.f32 0.0, %v6806
  %v6808 = vpop.f32.mrf.mxu0
  %v6809 = vadd.f32 0.0, %v6808
  %6810 = vmatmul.bf16.gmra.mxu0 %v6639
  %v6811 = vpop.f32.mrf.mxu0
  %v6812 = vadd.f32 0.0, %v6811
  %v6813 = vpop.f32.mrf.mxu0
  %v6814 = vadd.f32 0.0, %v6813
  %6815 = vmatmul.bf16.gmra.mxu0 %v6642
  %v6816 = vpop.f32.mrf.mxu0
  %v6817 = vadd.f32 0.0, %v6816
  %v6818 = vpop.f32.mrf.mxu0
  %v6819 = vadd.f32 0.0, %v6818
  %6820 = vmatmul.bf16.gmra.mxu0 %v6645
  %v6821 = vpop.f32.mrf.mxu0
  %v6822 = vadd.f32 0.0, %v6821
  %v6823 = vpop.f32.mrf.mxu0
  %v6824 = vadd.f32 0.0, %v6823
  %6825 = vmatmul.bf16.gmra.mxu0 %v6648
  %v6826 = vpop.f32.mrf.mxu0
  %v6827 = vadd.f32 0.0, %v6826
  %v6828 = vpop.f32.mrf.mxu0
  %v6829 = vadd.f32 0.0, %v6828
  %6830 = vmatmul.bf16.gmra.mxu0 %v6651
  %v6831 = vpop.f32.mrf.mxu0
  %v6832 = vadd.f32 0.0, %v6831
  %v6833 = vpop.f32.mrf.mxu0
  %v6834 = vadd.f32 0.0, %v6833
  %6835 = vmatmul.bf16.gmra.mxu0 %v6654
  %v6836 = vpop.f32.mrf.mxu0
  %v6837 = vadd.f32 0.0, %v6836
  %v6838 = vpop.f32.mrf.mxu0
  %v6839 = vadd.f32 0.0, %v6838
  %6840 = vmatmul.bf16.gmra.mxu0 %v6657
  %v6841 = vpop.f32.mrf.mxu0
  %v6842 = vadd.f32 0.0, %v6841
  %v6843 = vpop.f32.mrf.mxu0
  %v6844 = vadd.f32 0.0, %v6843
  %6845 = vmatmul.bf16.gmra.mxu0 %v6660
  %v6846 = vpop.f32.mrf.mxu0
  %v6847 = vadd.f32 0.0, %v6846
  %v6848 = vpop.f32.mrf.mxu0
  %v6849 = vadd.f32 0.0, %v6848
  %6850 = vdwg.mxu0
  %v6851 = vadd.f32 %v6430, %v6672
  %v6852 = vadd.f32 %v6431, %v6674
  %v6853 = vadd.f32 %v6432, %v6677
  %v6854 = vadd.f32 %v6433, %v6679
  %v6855 = vadd.f32 %v6434, %v6682
  %v6856 = vadd.f32 %v6435, %v6684
  %v6857 = vadd.f32 %v6436, %v6687
  %v6858 = vadd.f32 %v6437, %v6689
  %v6859 = vadd.f32 %v6438, %v6692
  %v6860 = vadd.f32 %v6439, %v6694
  %v6861 = vadd.f32 %v6440, %v6697
  %v6862 = vadd.f32 %v6441, %v6699
  %v6863 = vadd.f32 %v6442, %v6702
  %v6864 = vadd.f32 %v6443, %v6704
  %v6865 = vadd.f32 %v6444, %v6707
  %v6866 = vadd.f32 %v6445, %v6709
  %v6867 = vadd.f32 %v6446, %v6712
  %v6868 = vadd.f32 %v6447, %v6714
  %v6869 = vadd.f32 %v6448, %v6717
  %v6870 = vadd.f32 %v6449, %v6719
  %v6871 = vadd.f32 %v6450, %v6722
  %v6872 = vadd.f32 %v6451, %v6724
  %v6873 = vadd.f32 %v6452, %v6727
  %v6874 = vadd.f32 %v6453, %v6729
  %v6875 = vadd.f32 %v6454, %v6732
  %v6876 = vadd.f32 %v6455, %v6734
  %v6877 = vadd.f32 %v6456, %v6737
  %v6878 = vadd.f32 %v6457, %v6739
  %v6879 = vadd.f32 %v6458, %v6742
  %v6880 = vadd.f32 %v6459, %v6744
  %v6881 = vadd.f32 %v6460, %v6747
  %v6882 = vadd.f32 %v6461, %v6749
  %v6883 = vadd.f32 %v6462, %v6752
  %v6884 = vadd.f32 %v6463, %v6754
  %v6885 = vadd.f32 %v6464, %v6757
  %v6886 = vadd.f32 %v6465, %v6759
  %v6887 = vadd.f32 %v6466, %v6762
  %v6888 = vadd.f32 %v6467, %v6764
  %v6889 = vadd.f32 %v6468, %v6767
  %v6890 = vadd.f32 %v6469, %v6769
  %v6891 = vadd.f32 %v6470, %v6772
  %v6892 = vadd.f32 %v6471, %v6774
  %v6893 = vadd.f32 %v6472, %v6777
  %v6894 = vadd.f32 %v6473, %v6779
  %v6895 = vadd.f32 %v6474, %v6782
  %v6896 = vadd.f32 %v6475, %v6784
  %v6897 = vadd.f32 %v6476, %v6787
  %v6898 = vadd.f32 %v6477, %v6789
  %v6899 = vadd.f32 %v6478, %v6792
  %v6900 = vadd.f32 %v6479, %v6794
  %v6901 = vadd.f32 %v6480, %v6797
  %v6902 = vadd.f32 %v6481, %v6799
  %v6903 = vadd.f32 %v6482, %v6802
  %v6904 = vadd.f32 %v6483, %v6804
  %v6905 = vadd.f32 %v6484, %v6807
  %v6906 = vadd.f32 %v6485, %v6809
  %v6907 = vadd.f32 %v6486, %v6812
  %v6908 = vadd.f32 %v6487, %v6814
  %v6909 = vadd.f32 %v6488, %v6817
  %v6910 = vadd.f32 %v6489, %v6819
  %v6911 = vadd.f32 %v6490, %v6822
  %v6912 = vadd.f32 %v6491, %v6824
  %v6913 = vadd.f32 %v6492, %v6827
  %v6914 = vadd.f32 %v6493, %v6829
  %v6915 = vadd.f32 %v6494, %v6832
  %v6916 = vadd.f32 %v6495, %v6834
  %v6917 = vadd.f32 %v6496, %v6837
  %v6918 = vadd.f32 %v6497, %v6839
  %v6919 = vadd.f32 %v6498, %v6842
  %v6920 = vadd.f32 %v6499, %v6844
  %v6921 = vadd.f32 %v6500, %v6847
  %v6922 = vadd.f32 %v6501, %v6849
  %v6923 = vpack.c.bf16 %v6076, %v6075
  %v6924 = vpack.c.bf16 %v6078, %v6077
  %v6925 = vpack.c.bf16 %v6080, %v6079
  %v6926 = vld [vmem:[%s3220] sm:$0xf]
  %v6927 = vld [vmem:[%s3220 + $0x4] sm:$0xf]
  %v6928 = vld [vmem:[%s3220 + $0x8] sm:$0xf]
  %v6929 = vld [vmem:[%s3220 + $0xc] sm:$0xf]
  %v6934 = vunpack.c.l.b16 %v6926
  %v6935 = vunpack.c.l.b16 %v6927
  %v6936 = vunpack.c.l.b16 %v6928
  %v6937 = vunpack.c.l.b16 %v6929
  %v6938 = vpack.c.b16 %v6935, %v6934
  %v6939 = vpack.c.b16 %v6937, %v6936
  %v6943 = vsel %vm186, %v6923, 0
  %v6946 = vsel %vm186, %v6924, 0
  %v6949 = vsel %vm186, %v6925, 0
  %6951 = vmatpush.bf16.msra.mxu0 0
  %6952 = vmatpush.bf16.msra.mxu0 0
  %6953 = vmatpush.bf16.msra.mxu0 0
  %6954 = vmatpush.bf16.msra.mxu0 0
  %6955 = vmatpush.bf16.msra.mxu0 0
  %6956 = vmatpush.bf16.msra.mxu0 0
  %6957 = vmatpush.bf16.msra.mxu0 %v6939
  %6958 = vmatpush.bf16.msra.mxu0 %v6938
  %6959 = vmatmul.bf16.gmra.mxu0 %v6143
  %v6960 = vpop.f32.mrf.mxu0
  %v6961 = vadd.f32 0.0, %v6960
  %v6962 = vpop.f32.mrf.mxu0
  %v6963 = vadd.f32 0.0, %v6962
  %6964 = vmatmul.bf16.gmra.mxu0 %v6146
  %v6965 = vpop.f32.mrf.mxu0
  %v6966 = vadd.f32 0.0, %v6965
  %v6967 = vpop.f32.mrf.mxu0
  %v6968 = vadd.f32 0.0, %v6967
  %6969 = vmatmul.bf16.gmra.mxu0 %v6149
  %v6970 = vpop.f32.mrf.mxu0
  %v6971 = vadd.f32 0.0, %v6970
  %v6972 = vpop.f32.mrf.mxu0
  %v6973 = vadd.f32 0.0, %v6972
  %6974 = vmatmul.bf16.gmra.mxu0 %v6152
  %v6975 = vpop.f32.mrf.mxu0
  %v6976 = vadd.f32 0.0, %v6975
  %v6977 = vpop.f32.mrf.mxu0
  %v6978 = vadd.f32 0.0, %v6977
  %6979 = vmatmul.bf16.gmra.mxu0 %v6155
  %v6980 = vpop.f32.mrf.mxu0
  %v6981 = vadd.f32 0.0, %v6980
  %v6982 = vpop.f32.mrf.mxu0
  %v6983 = vadd.f32 0.0, %v6982
  %6984 = vmatmul.bf16.gmra.mxu0 %v6158
  %v6985 = vpop.f32.mrf.mxu0
  %v6986 = vadd.f32 0.0, %v6985
  %v6987 = vpop.f32.mrf.mxu0
  %v6988 = vadd.f32 0.0, %v6987
  %6989 = vmatmul.bf16.gmra.mxu0 %v6161
  %v6990 = vpop.f32.mrf.mxu0
  %v6991 = vadd.f32 0.0, %v6990
  %v6992 = vpop.f32.mrf.mxu0
  %v6993 = vadd.f32 0.0, %v6992
  %6994 = vmatmul.bf16.gmra.mxu0 %v6164
  %v6995 = vpop.f32.mrf.mxu0
  %v6996 = vadd.f32 0.0, %v6995
  %v6997 = vpop.f32.mrf.mxu0
  %v6998 = vadd.f32 0.0, %v6997
  %6999 = vmatmul.bf16.gmra.mxu0 %v6167
  %v7000 = vpop.f32.mrf.mxu0
  %v7001 = vadd.f32 0.0, %v7000
  %v7002 = vpop.f32.mrf.mxu0
  %v7003 = vadd.f32 0.0, %v7002
  %7004 = vmatmul.bf16.gmra.mxu0 %v6170
  %v7005 = vpop.f32.mrf.mxu0
  %v7006 = vadd.f32 0.0, %v7005
  %v7007 = vpop.f32.mrf.mxu0
  %v7008 = vadd.f32 0.0, %v7007
  %7009 = vmatmul.bf16.gmra.mxu0 %v6173
  %v7010 = vpop.f32.mrf.mxu0
  %v7011 = vadd.f32 0.0, %v7010
  %v7012 = vpop.f32.mrf.mxu0
  %v7013 = vadd.f32 0.0, %v7012
  %7014 = vmatmul.bf16.gmra.mxu0 %v6176
  %v7015 = vpop.f32.mrf.mxu0
  %v7016 = vadd.f32 0.0, %v7015
  %v7017 = vpop.f32.mrf.mxu0
  %v7018 = vadd.f32 0.0, %v7017
  %7019 = vmatmul.bf16.gmra.mxu0 %v6179
  %v7020 = vpop.f32.mrf.mxu0
  %v7021 = vadd.f32 0.0, %v7020
  %v7022 = vpop.f32.mrf.mxu0
  %v7023 = vadd.f32 0.0, %v7022
  %7024 = vmatmul.bf16.gmra.mxu0 %v6182
  %v7025 = vpop.f32.mrf.mxu0
  %v7026 = vadd.f32 0.0, %v7025
  %v7027 = vpop.f32.mrf.mxu0
  %v7028 = vadd.f32 0.0, %v7027
  %7029 = vmatmul.bf16.gmra.mxu0 %v6185
  %v7030 = vpop.f32.mrf.mxu0
  %v7031 = vadd.f32 0.0, %v7030
  %v7032 = vpop.f32.mrf.mxu0
  %v7033 = vadd.f32 0.0, %v7032
  %7034 = vmatmul.bf16.gmra.mxu0 %v6188
  %v7035 = vpop.f32.mrf.mxu0
  %v7036 = vadd.f32 0.0, %v7035
  %v7037 = vpop.f32.mrf.mxu0
  %v7038 = vadd.f32 0.0, %v7037
  %7039 = vmatmul.bf16.gmra.mxu0 %v6191
  %v7040 = vpop.f32.mrf.mxu0
  %v7041 = vadd.f32 0.0, %v7040
  %v7042 = vpop.f32.mrf.mxu0
  %v7043 = vadd.f32 0.0, %v7042
  %7044 = vmatmul.bf16.gmra.mxu0 %v6194
  %v7045 = vpop.f32.mrf.mxu0
  %v7046 = vadd.f32 0.0, %v7045
  %v7047 = vpop.f32.mrf.mxu0
  %v7048 = vadd.f32 0.0, %v7047
  %7049 = vmatmul.bf16.gmra.mxu0 %v6197
  %v7050 = vpop.f32.mrf.mxu0
  %v7051 = vadd.f32 0.0, %v7050
  %v7052 = vpop.f32.mrf.mxu0
  %v7053 = vadd.f32 0.0, %v7052
  %7054 = vmatmul.bf16.gmra.mxu0 %v6200
  %v7055 = vpop.f32.mrf.mxu0
  %v7056 = vadd.f32 0.0, %v7055
  %v7057 = vpop.f32.mrf.mxu0
  %v7058 = vadd.f32 0.0, %v7057
  %7059 = vmatmul.bf16.gmra.mxu0 %v6203
  %v7060 = vpop.f32.mrf.mxu0
  %v7061 = vadd.f32 0.0, %v7060
  %v7062 = vpop.f32.mrf.mxu0
  %v7063 = vadd.f32 0.0, %v7062
  %7064 = vmatmul.bf16.gmra.mxu0 %v6206
  %v7065 = vpop.f32.mrf.mxu0
  %v7066 = vadd.f32 0.0, %v7065
  %v7067 = vpop.f32.mrf.mxu0
  %v7068 = vadd.f32 0.0, %v7067
  %7069 = vmatmul.bf16.gmra.mxu0 %v6209
  %v7070 = vpop.f32.mrf.mxu0
  %v7071 = vadd.f32 0.0, %v7070
  %v7072 = vpop.f32.mrf.mxu0
  %v7073 = vadd.f32 0.0, %v7072
  %7074 = vmatmul.bf16.gmra.mxu0 %v6212
  %v7075 = vpop.f32.mrf.mxu0
  %v7076 = vadd.f32 0.0, %v7075
  %v7077 = vpop.f32.mrf.mxu0
  %v7078 = vadd.f32 0.0, %v7077
  %7079 = vmatmul.bf16.gmra.mxu0 %v6215
  %v7080 = vpop.f32.mrf.mxu0
  %v7081 = vadd.f32 0.0, %v7080
  %v7082 = vpop.f32.mrf.mxu0
  %v7083 = vadd.f32 0.0, %v7082
  %7084 = vmatmul.bf16.gmra.mxu0 %v6218
  %v7085 = vpop.f32.mrf.mxu0
  %v7086 = vadd.f32 0.0, %v7085
  %v7087 = vpop.f32.mrf.mxu0
  %v7088 = vadd.f32 0.0, %v7087
  %7089 = vmatmul.bf16.gmra.mxu0 %v6221
  %v7090 = vpop.f32.mrf.mxu0
  %v7091 = vadd.f32 0.0, %v7090
  %v7092 = vpop.f32.mrf.mxu0
  %v7093 = vadd.f32 0.0, %v7092
  %7094 = vmatmul.bf16.gmra.mxu0 %v6224
  %v7095 = vpop.f32.mrf.mxu0
  %v7096 = vadd.f32 0.0, %v7095
  %v7097 = vpop.f32.mrf.mxu0
  %v7098 = vadd.f32 0.0, %v7097
  %7099 = vmatmul.bf16.gmra.mxu0 %v6227
  %v7100 = vpop.f32.mrf.mxu0
  %v7101 = vadd.f32 0.0, %v7100
  %v7102 = vpop.f32.mrf.mxu0
  %v7103 = vadd.f32 0.0, %v7102
  %7104 = vmatmul.bf16.gmra.mxu0 %v6230
  %v7105 = vpop.f32.mrf.mxu0
  %v7106 = vadd.f32 0.0, %v7105
  %v7107 = vpop.f32.mrf.mxu0
  %v7108 = vadd.f32 0.0, %v7107
  %7109 = vmatmul.bf16.gmra.mxu0 %v6233
  %v7110 = vpop.f32.mrf.mxu0
  %v7111 = vadd.f32 0.0, %v7110
  %v7112 = vpop.f32.mrf.mxu0
  %v7113 = vadd.f32 0.0, %v7112
  %7114 = vmatmul.bf16.gmra.mxu0 %v6236
  %v7115 = vpop.f32.mrf.mxu0
  %v7116 = vadd.f32 0.0, %v7115
  %v7117 = vpop.f32.mrf.mxu0
  %v7118 = vadd.f32 0.0, %v7117
  %7119 = vmatmul.bf16.gmra.mxu0 %v6239
  %v7120 = vpop.f32.mrf.mxu0
  %v7121 = vadd.f32 0.0, %v7120
  %v7122 = vpop.f32.mrf.mxu0
  %v7123 = vadd.f32 0.0, %v7122
  %7124 = vmatmul.bf16.gmra.mxu0 %v6943
  %v7125 = vpop.f32.mrf.mxu0
  %v7126 = vadd.f32 0.0, %v7125
  %v7127 = vpop.f32.mrf.mxu0
  %v7128 = vadd.f32 0.0, %v7127
  %7129 = vmatmul.bf16.gmra.mxu0 %v6946
  %v7130 = vpop.f32.mrf.mxu0
  %v7131 = vadd.f32 0.0, %v7130
  %v7132 = vpop.f32.mrf.mxu0
  %v7133 = vadd.f32 0.0, %v7132
  %7134 = vmatmul.bf16.gmra.mxu0 %v6949
  %v7135 = vpop.f32.mrf.mxu0
  %v7136 = vadd.f32 0.0, %v7135
  %v7137 = vpop.f32.mrf.mxu0
  %v7138 = vadd.f32 0.0, %v7137
  %7139 = vdwg.mxu0
  %v7140 = vadd.f32 %v6851, %v6961
  %v7141 = vadd.f32 %v6852, %v6963
  %v7142 = vadd.f32 %v6853, %v6966
  %v7143 = vadd.f32 %v6854, %v6968
  %v7144 = vadd.f32 %v6855, %v6971
  %v7145 = vadd.f32 %v6856, %v6973
  %v7146 = vadd.f32 %v6857, %v6976
  %v7147 = vadd.f32 %v6858, %v6978
  %v7148 = vadd.f32 %v6859, %v6981
  %v7149 = vadd.f32 %v6860, %v6983
  %v7150 = vadd.f32 %v6861, %v6986
  %v7151 = vadd.f32 %v6862, %v6988
  %v7152 = vadd.f32 %v6863, %v6991
  %v7153 = vadd.f32 %v6864, %v6993
  %v7154 = vadd.f32 %v6865, %v6996
  %v7155 = vadd.f32 %v6866, %v6998
  %v7156 = vadd.f32 %v6867, %v7001
  %v7157 = vadd.f32 %v6868, %v7003
  %v7158 = vadd.f32 %v6869, %v7006
  %v7159 = vadd.f32 %v6870, %v7008
  %v7160 = vadd.f32 %v6871, %v7011
  %v7161 = vadd.f32 %v6872, %v7013
  %v7162 = vadd.f32 %v6873, %v7016
  %v7163 = vadd.f32 %v6874, %v7018
  %v7164 = vadd.f32 %v6875, %v7021
  %v7165 = vadd.f32 %v6876, %v7023
  %v7166 = vadd.f32 %v6877, %v7026
  %v7167 = vadd.f32 %v6878, %v7028
  %v7168 = vadd.f32 %v6879, %v7031
  %v7169 = vadd.f32 %v6880, %v7033
  %v7170 = vadd.f32 %v6881, %v7036
  %v7171 = vadd.f32 %v6882, %v7038
  %v7172 = vadd.f32 %v6883, %v7041
  %v7173 = vadd.f32 %v6884, %v7043
  %v7174 = vadd.f32 %v6885, %v7046
  %v7175 = vadd.f32 %v6886, %v7048
  %v7176 = vadd.f32 %v6887, %v7051
  %v7177 = vadd.f32 %v6888, %v7053
  %v7178 = vadd.f32 %v6889, %v7056
  %v7179 = vadd.f32 %v6890, %v7058
  %v7180 = vadd.f32 %v6891, %v7061
  %v7181 = vadd.f32 %v6892, %v7063
  %v7182 = vadd.f32 %v6893, %v7066
  %v7183 = vadd.f32 %v6894, %v7068
  %v7184 = vadd.f32 %v6895, %v7071
  %v7185 = vadd.f32 %v6896, %v7073
  %v7186 = vadd.f32 %v6897, %v7076
  %v7187 = vadd.f32 %v6898, %v7078
  %v7188 = vadd.f32 %v6899, %v7081
  %v7189 = vadd.f32 %v6900, %v7083
  %v7190 = vadd.f32 %v6901, %v7086
  %v7191 = vadd.f32 %v6902, %v7088
  %v7192 = vadd.f32 %v6903, %v7091
  %v7193 = vadd.f32 %v6904, %v7093
  %v7194 = vadd.f32 %v6905, %v7096
  %v7195 = vadd.f32 %v6906, %v7098
  %v7196 = vadd.f32 %v6907, %v7101
  %v7197 = vadd.f32 %v6908, %v7103
  %v7198 = vadd.f32 %v6909, %v7106
  %v7199 = vadd.f32 %v6910, %v7108
  %v7200 = vadd.f32 %v6911, %v7111
  %v7201 = vadd.f32 %v6912, %v7113
  %v7202 = vadd.f32 %v6913, %v7116
  %v7203 = vadd.f32 %v6914, %v7118
  %v7204 = vadd.f32 %v6915, %v7121
  %v7205 = vadd.f32 %v6916, %v7123
  %v7206 = vadd.f32 %v6917, %v7126
  %v7207 = vadd.f32 %v6918, %v7128
  %v7208 = vadd.f32 %v6919, %v7131
  %v7209 = vadd.f32 %v6920, %v7133
  %v7210 = vadd.f32 %v6921, %v7136
  %v7211 = vadd.f32 %v6922, %v7138
  %v7212 = vld [vmem:[%s2] sm:$0x1]
  %v7214 = vperm.slane %v7212, 0
  %v7216 = vadd.f32 %v7140, %v7214
  %v7217 = vadd.f32 %v7141, %v7214
  %v7218 = vadd.f32 %v7142, %v7214
  %v7219 = vadd.f32 %v7143, %v7214
  %v7220 = vadd.f32 %v7144, %v7214
  %v7221 = vadd.f32 %v7145, %v7214
  %v7222 = vadd.f32 %v7146, %v7214
  %v7223 = vadd.f32 %v7147, %v7214
  %v7224 = vadd.f32 %v7148, %v7214
  %v7225 = vadd.f32 %v7149, %v7214
  %v7226 = vadd.f32 %v7150, %v7214
  %v7227 = vadd.f32 %v7151, %v7214
  %v7228 = vadd.f32 %v7152, %v7214
  %v7229 = vadd.f32 %v7153, %v7214
  %v7230 = vadd.f32 %v7154, %v7214
  %v7231 = vadd.f32 %v7155, %v7214
  %v7232 = vadd.f32 %v7156, %v7214
  %v7233 = vadd.f32 %v7157, %v7214
  %v7234 = vadd.f32 %v7158, %v7214
  %v7235 = vadd.f32 %v7159, %v7214
  %v7236 = vadd.f32 %v7160, %v7214
  %v7237 = vadd.f32 %v7161, %v7214
  %v7238 = vadd.f32 %v7162, %v7214
  %v7239 = vadd.f32 %v7163, %v7214
  %v7240 = vadd.f32 %v7164, %v7214
  %v7241 = vadd.f32 %v7165, %v7214
  %v7242 = vadd.f32 %v7166, %v7214
  %v7243 = vadd.f32 %v7167, %v7214
  %v7244 = vadd.f32 %v7168, %v7214
  %v7245 = vadd.f32 %v7169, %v7214
  %v7246 = vadd.f32 %v7170, %v7214
  %v7247 = vadd.f32 %v7171, %v7214
  %v7248 = vadd.f32 %v7172, %v7214
  %v7249 = vadd.f32 %v7173, %v7214
  %v7250 = vadd.f32 %v7174, %v7214
  %v7251 = vadd.f32 %v7175, %v7214
  %v7252 = vadd.f32 %v7176, %v7214
  %v7253 = vadd.f32 %v7177, %v7214
  %v7254 = vadd.f32 %v7178, %v7214
  %v7255 = vadd.f32 %v7179, %v7214
  %v7256 = vadd.f32 %v7180, %v7214
  %v7257 = vadd.f32 %v7181, %v7214
  %v7258 = vadd.f32 %v7182, %v7214
  %v7259 = vadd.f32 %v7183, %v7214
  %v7260 = vadd.f32 %v7184, %v7214
  %v7261 = vadd.f32 %v7185, %v7214
  %v7262 = vadd.f32 %v7186, %v7214
  %v7263 = vadd.f32 %v7187, %v7214
  %v7264 = vadd.f32 %v7188, %v7214
  %v7265 = vadd.f32 %v7189, %v7214
  %v7266 = vadd.f32 %v7190, %v7214
  %v7267 = vadd.f32 %v7191, %v7214
  %v7268 = vadd.f32 %v7192, %v7214
  %v7269 = vadd.f32 %v7193, %v7214
  %v7270 = vadd.f32 %v7194, %v7214
  %v7271 = vadd.f32 %v7195, %v7214
  %v7272 = vadd.f32 %v7196, %v7214
  %v7273 = vadd.f32 %v7197, %v7214
  %v7274 = vadd.f32 %v7198, %v7214
  %v7275 = vadd.f32 %v7199, %v7214
  %v7276 = vadd.f32 %v7200, %v7214
  %v7277 = vadd.f32 %v7201, %v7214
  %v7278 = vadd.f32 %v7202, %v7214
  %v7279 = vadd.f32 %v7203, %v7214
  %v7280 = vadd.f32 %v7204, %v7214
  %v7281 = vadd.f32 %v7205, %v7214
  %v7282 = vadd.f32 %v7206, %v7214
  %v7283 = vadd.f32 %v7207, %v7214
  %v7284 = vadd.f32 %v7208, %v7214
  %v7285 = vadd.f32 %v7209, %v7214
  %v7286 = vadd.f32 %v7210, %v7214
  %v7287 = vadd.f32 %v7211, %v7214
  %v7288 = vpack.c.bf16 %v7216, %v7216
  %v7289 = vpack.c.bf16 %v7217, %v7217
  %v7290 = vpack.c.bf16 %v7218, %v7218
  %v7291 = vpack.c.bf16 %v7219, %v7219
  %v7292 = vpack.c.bf16 %v7220, %v7220
  %v7293 = vpack.c.bf16 %v7221, %v7221
  %v7294 = vpack.c.bf16 %v7222, %v7222
  %v7295 = vpack.c.bf16 %v7223, %v7223
  %v7296 = vpack.c.bf16 %v7224, %v7224
  %v7297 = vpack.c.bf16 %v7225, %v7225
  %v7298 = vpack.c.bf16 %v7226, %v7226
  %v7299 = vpack.c.bf16 %v7227, %v7227
  %v7300 = vpack.c.bf16 %v7228, %v7228
  %v7301 = vpack.c.bf16 %v7229, %v7229
  %v7302 = vpack.c.bf16 %v7230, %v7230
  %v7303 = vpack.c.bf16 %v7231, %v7231
  %v7304 = vpack.c.bf16 %v7232, %v7232
  %v7305 = vpack.c.bf16 %v7233, %v7233
  %v7306 = vpack.c.bf16 %v7234, %v7234
  %v7307 = vpack.c.bf16 %v7235, %v7235
  %v7308 = vpack.c.bf16 %v7236, %v7236
  %v7309 = vpack.c.bf16 %v7237, %v7237
  %v7310 = vpack.c.bf16 %v7238, %v7238
  %v7311 = vpack.c.bf16 %v7239, %v7239
  %v7312 = vpack.c.bf16 %v7240, %v7240
  %v7313 = vpack.c.bf16 %v7241, %v7241
  %v7314 = vpack.c.bf16 %v7242, %v7242
  %v7315 = vpack.c.bf16 %v7243, %v7243
  %v7316 = vpack.c.bf16 %v7244, %v7244
  %v7317 = vpack.c.bf16 %v7245, %v7245
  %v7318 = vpack.c.bf16 %v7246, %v7246
  %v7319 = vpack.c.bf16 %v7247, %v7247
  %v7320 = vpack.c.bf16 %v7248, %v7248
  %v7321 = vpack.c.bf16 %v7249, %v7249
  %v7322 = vpack.c.bf16 %v7250, %v7250
  %v7323 = vpack.c.bf16 %v7251, %v7251
  %v7324 = vpack.c.bf16 %v7252, %v7252
  %v7325 = vpack.c.bf16 %v7253, %v7253
  %v7326 = vpack.c.bf16 %v7254, %v7254
  %v7327 = vpack.c.bf16 %v7255, %v7255
  %v7328 = vpack.c.bf16 %v7256, %v7256
  %v7329 = vpack.c.bf16 %v7257, %v7257
  %v7330 = vpack.c.bf16 %v7258, %v7258
  %v7331 = vpack.c.bf16 %v7259, %v7259
  %v7332 = vpack.c.bf16 %v7260, %v7260
  %v7333 = vpack.c.bf16 %v7261, %v7261
  %v7334 = vpack.c.bf16 %v7262, %v7262
  %v7335 = vpack.c.bf16 %v7263, %v7263
  %v7336 = vpack.c.bf16 %v7264, %v7264
  %v7337 = vpack.c.bf16 %v7265, %v7265
  %v7338 = vpack.c.bf16 %v7266, %v7266
  %v7339 = vpack.c.bf16 %v7267, %v7267
  %v7340 = vpack.c.bf16 %v7268, %v7268
  %v7341 = vpack.c.bf16 %v7269, %v7269
  %v7342 = vpack.c.bf16 %v7270, %v7270
  %v7343 = vpack.c.bf16 %v7271, %v7271
  %v7344 = vpack.c.bf16 %v7272, %v7272
  %v7345 = vpack.c.bf16 %v7273, %v7273
  %v7346 = vpack.c.bf16 %v7274, %v7274
  %v7347 = vpack.c.bf16 %v7275, %v7275
  %v7348 = vpack.c.bf16 %v7276, %v7276
  %v7349 = vpack.c.bf16 %v7277, %v7277
  %v7350 = vpack.c.bf16 %v7278, %v7278
  %v7351 = vpack.c.bf16 %v7279, %v7279
  %v7352 = vpack.c.bf16 %v7280, %v7280
  %v7353 = vpack.c.bf16 %v7281, %v7281
  %v7354 = vpack.c.bf16 %v7282, %v7282
  %v7355 = vpack.c.bf16 %v7283, %v7283
  %v7356 = vpack.c.bf16 %v7284, %v7284
  %v7357 = vpack.c.bf16 %v7285, %v7285
  %v7358 = vpack.c.bf16 %v7286, %v7286
  %v7359 = vpack.c.bf16 %v7287, %v7287
  %s7360 = scalar_lea.vmem %s3, 288
  %7361 = vst.msk [vmem:[%s7360] sm:$0xf] %vm3655, %v7288
  %7362 = vst.msk [vmem:[%s7360 + $0x4] sm:$0xf] %vm3655, %v7289
  %7363 = vst.msk [vmem:[%s7360 + $0x8] sm:$0xf] %vm3655, %v7290
  %7364 = vst.msk [vmem:[%s7360 + $0xc] sm:$0xf] %vm3655, %v7291
  %7365 = vst.msk [vmem:[%s7360 + $0x10] sm:$0xf] %vm3655, %v7292
  %7366 = vst.msk [vmem:[%s7360 + $0x14] sm:$0xf] %vm3655, %v7293
  %7367 = vst.msk [vmem:[%s7360 + $0x18] sm:$0xf] %vm3655, %v7294
  %7368 = vst.msk [vmem:[%s7360 + $0x1c] sm:$0xf] %vm3655, %v7295
  %7369 = vst.msk [vmem:[%s7360 + $0x20] sm:$0xf] %vm3655, %v7296
  %7370 = vst.msk [vmem:[%s7360 + $0x24] sm:$0xf] %vm3655, %v7297
  %7371 = vst.msk [vmem:[%s7360 + $0x28] sm:$0xf] %vm3655, %v7298
  %7372 = vst.msk [vmem:[%s7360 + $0x2c] sm:$0xf] %vm3655, %v7299
  %7373 = vst.msk [vmem:[%s7360 + $0x30] sm:$0xf] %vm3655, %v7300
  %7374 = vst.msk [vmem:[%s7360 + $0x34] sm:$0xf] %vm3655, %v7301
  %7375 = vst.msk [vmem:[%s7360 + $0x38] sm:$0xf] %vm3655, %v7302
  %7376 = vst.msk [vmem:[%s7360 + $0x3c] sm:$0xf] %vm3655, %v7303
  %7377 = vst.msk [vmem:[%s7360 + $0x40] sm:$0xf] %vm3655, %v7304
  %7378 = vst.msk [vmem:[%s7360 + $0x44] sm:$0xf] %vm3655, %v7305
  %7379 = vst.msk [vmem:[%s7360 + $0x48] sm:$0xf] %vm3655, %v7306
  %7380 = vst.msk [vmem:[%s7360 + $0x4c] sm:$0xf] %vm3655, %v7307
  %7381 = vst.msk [vmem:[%s7360 + $0x50] sm:$0xf] %vm3655, %v7308
  %7382 = vst.msk [vmem:[%s7360 + $0x54] sm:$0xf] %vm3655, %v7309
  %7383 = vst.msk [vmem:[%s7360 + $0x58] sm:$0xf] %vm3655, %v7310
  %7384 = vst.msk [vmem:[%s7360 + $0x5c] sm:$0xf] %vm3655, %v7311
  %7385 = vst.msk [vmem:[%s7360 + $0x60] sm:$0xf] %vm3655, %v7312
  %7386 = vst.msk [vmem:[%s7360 + $0x64] sm:$0xf] %vm3655, %v7313
  %7387 = vst.msk [vmem:[%s7360 + $0x68] sm:$0xf] %vm3655, %v7314
  %7388 = vst.msk [vmem:[%s7360 + $0x6c] sm:$0xf] %vm3655, %v7315
  %7389 = vst.msk [vmem:[%s7360 + $0x70] sm:$0xf] %vm3655, %v7316
  %7390 = vst.msk [vmem:[%s7360 + $0x74] sm:$0xf] %vm3655, %v7317
  %7391 = vst.msk [vmem:[%s7360 + $0x78] sm:$0xf] %vm3655, %v7318
  %7392 = vst.msk [vmem:[%s7360 + $0x7c] sm:$0xf] %vm3655, %v7319
  %7393 = vst.msk [vmem:[%s7360 + $0x80] sm:$0xf] %vm3655, %v7320
  %7394 = vst.msk [vmem:[%s7360 + $0x84] sm:$0xf] %vm3655, %v7321
  %7395 = vst.msk [vmem:[%s7360 + $0x88] sm:$0xf] %vm3655, %v7322
  %7396 = vst.msk [vmem:[%s7360 + $0x8c] sm:$0xf] %vm3655, %v7323
  %7397 = vst.msk [vmem:[%s7360 + $0x90] sm:$0xf] %vm3655, %v7324
  %7398 = vst.msk [vmem:[%s7360 + $0x94] sm:$0xf] %vm3655, %v7325
  %7399 = vst.msk [vmem:[%s7360 + $0x98] sm:$0xf] %vm3655, %v7326
  %7400 = vst.msk [vmem:[%s7360 + $0x9c] sm:$0xf] %vm3655, %v7327
  %7401 = vst.msk [vmem:[%s7360 + $0xa0] sm:$0xf] %vm3655, %v7328
  %7402 = vst.msk [vmem:[%s7360 + $0xa4] sm:$0xf] %vm3655, %v7329
  %7403 = vst.msk [vmem:[%s7360 + $0xa8] sm:$0xf] %vm3655, %v7330
  %7404 = vst.msk [vmem:[%s7360 + $0xac] sm:$0xf] %vm3655, %v7331
  %7405 = vst.msk [vmem:[%s7360 + $0xb0] sm:$0xf] %vm3655, %v7332
  %7406 = vst.msk [vmem:[%s7360 + $0xb4] sm:$0xf] %vm3655, %v7333
  %7407 = vst.msk [vmem:[%s7360 + $0xb8] sm:$0xf] %vm3655, %v7334
  %7408 = vst.msk [vmem:[%s7360 + $0xbc] sm:$0xf] %vm3655, %v7335
  %7409 = vst.msk [vmem:[%s7360 + $0xc0] sm:$0xf] %vm3655, %v7336
  %7410 = vst.msk [vmem:[%s7360 + $0xc4] sm:$0xf] %vm3655, %v7337
  %7411 = vst.msk [vmem:[%s7360 + $0xc8] sm:$0xf] %vm3655, %v7338
  %7412 = vst.msk [vmem:[%s7360 + $0xcc] sm:$0xf] %vm3655, %v7339
  %7413 = vst.msk [vmem:[%s7360 + $0xd0] sm:$0xf] %vm3655, %v7340
  %7414 = vst.msk [vmem:[%s7360 + $0xd4] sm:$0xf] %vm3655, %v7341
  %7415 = vst.msk [vmem:[%s7360 + $0xd8] sm:$0xf] %vm3655, %v7342
  %7416 = vst.msk [vmem:[%s7360 + $0xdc] sm:$0xf] %vm3655, %v7343
  %7417 = vst.msk [vmem:[%s7360 + $0xe0] sm:$0xf] %vm3655, %v7344
  %7418 = vst.msk [vmem:[%s7360 + $0xe4] sm:$0xf] %vm3655, %v7345
  %7419 = vst.msk [vmem:[%s7360 + $0xe8] sm:$0xf] %vm3655, %v7346
  %7420 = vst.msk [vmem:[%s7360 + $0xec] sm:$0xf] %vm3655, %v7347
  %7421 = vst.msk [vmem:[%s7360 + $0xf0] sm:$0xf] %vm3655, %v7348
  %7422 = vst.msk [vmem:[%s7360 + $0xf4] sm:$0xf] %vm3655, %v7349
  %7423 = vst.msk [vmem:[%s7360 + $0xf8] sm:$0xf] %vm3655, %v7350
  %7424 = vst.msk [vmem:[%s7360 + $0xfc] sm:$0xf] %vm3655, %v7351
  %7425 = vst.msk [vmem:[%s7360 + $0x100] sm:$0xf] %vm3655, %v7352
  %7426 = vst.msk [vmem:[%s7360 + $0x104] sm:$0xf] %vm3655, %v7353
  %7427 = vst.msk [vmem:[%s7360 + $0x108] sm:$0xf] %vm3655, %v7354
  %7428 = vst.msk [vmem:[%s7360 + $0x10c] sm:$0xf] %vm3655, %v7355
  %7429 = vst.msk [vmem:[%s7360 + $0x110] sm:$0xf] %vm3655, %v7356
  %7430 = vst.msk [vmem:[%s7360 + $0x114] sm:$0xf] %vm3655, %v7357
  %7431 = vst.msk [vmem:[%s7360 + $0x118] sm:$0xf] %vm3655, %v7358
  %7432 = vst.msk [vmem:[%s7360 + $0x11c] sm:$0xf] %vm3655, %v7359
  // Predicated region
  $region14: #{net_forward.4} parent=0 // pred_check
    _
  $region15: #{net_forward.4} parent=0 // pred_check_branch
    %7434 = sbr.rel (0) target = $region17
  $region16: #{net_forward.4} parent=0 // pred_region
    _
  $region17: #{net_forward.4} parent=0 // pred_fallthru
    _
  // Predicated region
  $region18: #{net_forward.4} parent=0 // pred_check
    _
  $region19: #{net_forward.4} parent=0 // pred_check_branch
    %7436 = sbr.rel (0) target = $region21
  $region20: #{net_forward.4} parent=0 // pred_region
    _
  $region21: #{net_forward.4} parent=0 // pred_fallthru
    _

// kernel: net_forward.5
$region0: #{net_forward.5}
  #allocation0 [shape = 'u32[]', space=smem, size = 0x4, offset = 0x4, fixed_abs, tag = 'smem constant byte address 0x4 - core index']
  #allocation1 [shape = 'u32[72,128]{1,0:T(1,128)}', space=vmem, size = 0x9000, scoped, tag = 'internal scratch']
  %s0 = inlined_call_operand.vmem [shape: bf16[2,9216], index: 0, kind: input, shape index: {}]
  %s1 = inlined_call_operand.vmem [shape: bf16[9216,128], index: 1, kind: input, shape index: {}]
  %s2 = inlined_call_operand.vmem [shape: f32[1,128], index: 2, kind: input, shape index: {}]
  %s3 = inlined_call_operand.vmem [shape: bf16[128,10], index: 3, kind: input, shape index: {}]
  %s4 = inlined_call_operand.vmem [shape: f32[1,10], index: 4, kind: input, shape index: {}]
  %s5 = inlined_call_operand.hbm [shape: f32[2,10], index: 5, kind: output, shape index: {}]
  %s6 = sld [smem:[#allocation0]]
  $region30: #{net_forward.5} parent=0
    _
  %s8 = ssub.s32 1, %s6
  %s9 = scalar_select 0, %s8, %s6
  $region1: #{net_forward.5} parent=0
    #allocation2 [shape = 'u8[1024]{0}', space=vmem, size = 0x400, scoped, tag = 'output window, operand 0, single buffered']
    #allocation3 [shape = 's32[1]{0}', space=sflag, size = 0x4, scoped, tag = 'scoped memory for net_forward.5']
    %10 = vsyncpa [#allocation3], 0
    // Predicated region
    $region2: #{net_forward.5} parent=1 // pred_check
      _
    $region3: #{net_forward.5} parent=1 // pred_check_branch
      %12 = sbr.rel (0) target = $region5
    $region4: #{net_forward.5} parent=1 // pred_region
      _
    $region5: #{net_forward.5} parent=1 // pred_fallthru
      _
    // Predicated region
    $region6: #{net_forward.5} parent=1 // pred_check
      _
    $region7: #{net_forward.5} parent=1 // pred_check_branch
      %14 = sbr.rel (0) target = $region9
    $region8: #{net_forward.5} parent=1 // pred_region
      _
    $region9: #{net_forward.5} parent=1 // pred_fallthru
      _
    // Predicated region
    $region10: #{net_forward.5} parent=1 // pred_check
      _
    $region11: #{net_forward.5} parent=1 // pred_check_branch
      %16 = sbr.rel (0) target = $region13
    $region12: #{net_forward.5} parent=1 // pred_region
      _
    $region13: #{net_forward.5} parent=1 // pred_fallthru
      _
    // Predicated region
    $region14: #{net_forward.5} parent=1 // pred_check
      _
    $region15: #{net_forward.5} parent=1 // pred_check_branch
      %18 = sbr.rel (0) target = $region17
    $region16: #{net_forward.5} parent=1 // pred_region
      _
    $region17: #{net_forward.5} parent=1 // pred_fallthru
      _
    // Predicated region
    $region18: #{net_forward.5} parent=1 // pred_check
      _
    $region19: #{net_forward.5} parent=1 // pred_check_branch
      %20 = sbr.rel (0) target = $region21
    $region20: #{net_forward.5} parent=1 // pred_region
      _
    $region21: #{net_forward.5} parent=1 // pred_fallthru
      _
    %v21 = vld [vmem:[%s0] sm:$0xff]
    %v22 = vld [vmem:[%s0 + $0x8] sm:$0xff]
    %v23 = vld [vmem:[%s0 + $0x10] sm:$0xff]
    %v24 = vld [vmem:[%s0 + $0x18] sm:$0xff]
    %v25 = vld [vmem:[%s0 + $0x20] sm:$0xff]
    %v26 = vld [vmem:[%s0 + $0x28] sm:$0xff]
    %v27 = vld [vmem:[%s0 + $0x30] sm:$0xff]
    %v28 = vld [vmem:[%s0 + $0x38] sm:$0xff]
    %v29 = vld [vmem:[%s0 + $0x40] sm:$0xff]
    %v30 = vld [vmem:[%s1] sm:$0xf]
    %v31 = vld [vmem:[%s1 + $0x4] sm:$0xf]
    %v32 = vld [vmem:[%s1 + $0x8] sm:$0xf]
    %v33 = vld [vmem:[%s1 + $0xc] sm:$0xf]
    %v34 = vld [vmem:[%s1 + $0x10] sm:$0xf]
    %v35 = vld [vmem:[%s1 + $0x14] sm:$0xf]
    %v36 = vld [vmem:[%s1 + $0x18] sm:$0xf]
    %v37 = vld [vmem:[%s1 + $0x1c] sm:$0xf]
    %v38 = vld [vmem:[%s1 + $0x20] sm:$0xf]
    %v39 = vld [vmem:[%s1 + $0x24] sm:$0xf]
    %v40 = vld [vmem:[%s1 + $0x28] sm:$0xf]
    %v41 = vld [vmem:[%s1 + $0x2c] sm:$0xf]
    %v42 = vld [vmem:[%s1 + $0x30] sm:$0xf]
    %v43 = vld [vmem:[%s1 + $0x34] sm:$0xf]
    %v44 = vld [vmem:[%s1 + $0x38] sm:$0xf]
    %v45 = vld [vmem:[%s1 + $0x3c] sm:$0xf]
    %v46 = vld [vmem:[%s1 + $0x40] sm:$0xf]
    %v47 = vld [vmem:[%s1 + $0x44] sm:$0xf]
    %v48 = vld [vmem:[%s1 + $0x48] sm:$0xf]
    %v49 = vld [vmem:[%s1 + $0x4c] sm:$0xf]
    %v50 = vld [vmem:[%s1 + $0x50] sm:$0xf]
    %v51 = vld [vmem:[%s1 + $0x54] sm:$0xf]
    %v52 = vld [vmem:[%s1 + $0x58] sm:$0xf]
    %v53 = vld [vmem:[%s1 + $0x5c] sm:$0xf]
    %v54 = vld [vmem:[%s1 + $0x60] sm:$0xf]
    %v55 = vld [vmem:[%s1 + $0x64] sm:$0xf]
    %v56 = vld [vmem:[%s1 + $0x68] sm:$0xf]
    %v57 = vld [vmem:[%s1 + $0x6c] sm:$0xf]
    %v58 = vld [vmem:[%s1 + $0x70] sm:$0xf]
    %v59 = vld [vmem:[%s1 + $0x74] sm:$0xf]
    %v60 = vld [vmem:[%s1 + $0x78] sm:$0xf]
    %v61 = vld [vmem:[%s1 + $0x7c] sm:$0xf]
    %v62 = vld [vmem:[%s1 + $0x80] sm:$0xf]
    %v63 = vld [vmem:[%s1 + $0x84] sm:$0xf]
    %v64 = vld [vmem:[%s1 + $0x88] sm:$0xf]
    %v65 = vld [vmem:[%s1 + $0x8c] sm:$0xf]
    %v66 = vld [vmem:[%s1 + $0x90] sm:$0xf]
    %v67 = vld [vmem:[%s1 + $0x94] sm:$0xf]
    %v68 = vld [vmem:[%s1 + $0x98] sm:$0xf]
    %v69 = vld [vmem:[%s1 + $0x9c] sm:$0xf]
    %v70 = vld [vmem:[%s1 + $0xa0] sm:$0xf]
    %v71 = vld [vmem:[%s1 + $0xa4] sm:$0xf]
    %v72 = vld [vmem:[%s1 + $0xa8] sm:$0xf]
    %v73 = vld [vmem:[%s1 + $0xac] sm:$0xf]
    %v74 = vld [vmem:[%s1 + $0xb0] sm:$0xf]
    %v75 = vld [vmem:[%s1 + $0xb4] sm:$0xf]
    %v76 = vld [vmem:[%s1 + $0xb8] sm:$0xf]
    %v77 = vld [vmem:[%s1 + $0xbc] sm:$0xf]
    %v78 = vld [vmem:[%s1 + $0xc0] sm:$0xf]
    %v79 = vld [vmem:[%s1 + $0xc4] sm:$0xf]
    %v80 = vld [vmem:[%s1 + $0xc8] sm:$0xf]
    %v81 = vld [vmem:[%s1 + $0xcc] sm:$0xf]
    %v82 = vld [vmem:[%s1 + $0xd0] sm:$0xf]
    %v83 = vld [vmem:[%s1 + $0xd4] sm:$0xf]
    %v84 = vld [vmem:[%s1 + $0xd8] sm:$0xf]
    %v85 = vld [vmem:[%s1 + $0xdc] sm:$0xf]
    %v86 = vld [vmem:[%s1 + $0xe0] sm:$0xf]
    %v87 = vld [vmem:[%s1 + $0xe4] sm:$0xf]
    %v88 = vld [vmem:[%s1 + $0xe8] sm:$0xf]
    %v89 = vld [vmem:[%s1 + $0xec] sm:$0xf]
    %v90 = vld [vmem:[%s1 + $0xf0] sm:$0xf]
    %v91 = vld [vmem:[%s1 + $0xf4] sm:$0xf]
    %v92 = vld [vmem:[%s1 + $0xf8] sm:$0xf]
    %v93 = vld [vmem:[%s1 + $0xfc] sm:$0xf]
    %v94 = vld [vmem:[%s1 + $0x100] sm:$0xf]
    %v95 = vld [vmem:[%s1 + $0x104] sm:$0xf]
    %v96 = vld [vmem:[%s1 + $0x108] sm:$0xf]
    %v97 = vld [vmem:[%s1 + $0x10c] sm:$0xf]
    %v98 = vld [vmem:[%s1 + $0x110] sm:$0xf]
    %v99 = vld [vmem:[%s1 + $0x114] sm:$0xf]
    %v100 = vld [vmem:[%s1 + $0x118] sm:$0xf]
    %v101 = vld [vmem:[%s1 + $0x11c] sm:$0xf]
    %v102 = vld [vmem:[%s1 + $0x120] sm:$0xf]
    %v103 = vld [vmem:[%s1 + $0x124] sm:$0xf]
    %v104 = vld [vmem:[%s1 + $0x128] sm:$0xf]
    %v105 = vld [vmem:[%s1 + $0x12c] sm:$0xf]
    %v106 = vld [vmem:[%s1 + $0x130] sm:$0xf]
    %v107 = vld [vmem:[%s1 + $0x134] sm:$0xf]
    %v108 = vld [vmem:[%s1 + $0x138] sm:$0xf]
    %v109 = vld [vmem:[%s1 + $0x13c] sm:$0xf]
    %v110 = vld [vmem:[%s1 + $0x140] sm:$0xf]
    %v111 = vld [vmem:[%s1 + $0x144] sm:$0xf]
    %v112 = vld [vmem:[%s1 + $0x148] sm:$0xf]
    %v113 = vld [vmem:[%s1 + $0x14c] sm:$0xf]
    %v114 = vld [vmem:[%s1 + $0x150] sm:$0xf]
    %v115 = vld [vmem:[%s1 + $0x154] sm:$0xf]
    %v116 = vld [vmem:[%s1 + $0x158] sm:$0xf]
    %v117 = vld [vmem:[%s1 + $0x15c] sm:$0xf]
    %v118 = vld [vmem:[%s1 + $0x160] sm:$0xf]
    %v119 = vld [vmem:[%s1 + $0x164] sm:$0xf]
    %v120 = vld [vmem:[%s1 + $0x168] sm:$0xf]
    %v121 = vld [vmem:[%s1 + $0x16c] sm:$0xf]
    %v122 = vld [vmem:[%s1 + $0x170] sm:$0xf]
    %v123 = vld [vmem:[%s1 + $0x174] sm:$0xf]
    %v124 = vld [vmem:[%s1 + $0x178] sm:$0xf]
    %v125 = vld [vmem:[%s1 + $0x17c] sm:$0xf]
    %v126 = vld [vmem:[%s1 + $0x180] sm:$0xf]
    %v127 = vld [vmem:[%s1 + $0x184] sm:$0xf]
    %v128 = vld [vmem:[%s1 + $0x188] sm:$0xf]
    %v129 = vld [vmem:[%s1 + $0x18c] sm:$0xf]
    %v130 = vld [vmem:[%s1 + $0x190] sm:$0xf]
    %v131 = vld [vmem:[%s1 + $0x194] sm:$0xf]
    %v132 = vld [vmem:[%s1 + $0x198] sm:$0xf]
    %v133 = vld [vmem:[%s1 + $0x19c] sm:$0xf]
    %v134 = vld [vmem:[%s1 + $0x1a0] sm:$0xf]
    %v135 = vld [vmem:[%s1 + $0x1a4] sm:$0xf]
    %v136 = vld [vmem:[%s1 + $0x1a8] sm:$0xf]
    %v137 = vld [vmem:[%s1 + $0x1ac] sm:$0xf]
    %v138 = vld [vmem:[%s1 + $0x1b0] sm:$0xf]
    %v139 = vld [vmem:[%s1 + $0x1b4] sm:$0xf]
    %v140 = vld [vmem:[%s1 + $0x1b8] sm:$0xf]
    %v141 = vld [vmem:[%s1 + $0x1bc] sm:$0xf]
    %v142 = vld [vmem:[%s1 + $0x1c0] sm:$0xf]
    %v143 = vld [vmem:[%s1 + $0x1c4] sm:$0xf]
    %v144 = vld [vmem:[%s1 + $0x1c8] sm:$0xf]
    %v145 = vld [vmem:[%s1 + $0x1cc] sm:$0xf]
    %v146 = vld [vmem:[%s1 + $0x1d0] sm:$0xf]
    %v147 = vld [vmem:[%s1 + $0x1d4] sm:$0xf]
    %v148 = vld [vmem:[%s1 + $0x1d8] sm:$0xf]
    %v149 = vld [vmem:[%s1 + $0x1dc] sm:$0xf]
    %v150 = vld [vmem:[%s1 + $0x1e0] sm:$0xf]
    %v151 = vld [vmem:[%s1 + $0x1e4] sm:$0xf]
    %v152 = vld [vmem:[%s1 + $0x1e8] sm:$0xf]
    %v153 = vld [vmem:[%s1 + $0x1ec] sm:$0xf]
    %v154 = vld [vmem:[%s1 + $0x1f0] sm:$0xf]
    %v155 = vld [vmem:[%s1 + $0x1f4] sm:$0xf]
    %v156 = vld [vmem:[%s1 + $0x1f8] sm:$0xf]
    %v157 = vld [vmem:[%s1 + $0x1fc] sm:$0xf]
    %v158 = vld [vmem:[%s1 + $0x200] sm:$0xf]
    %v159 = vld [vmem:[%s1 + $0x204] sm:$0xf]
    %v160 = vld [vmem:[%s1 + $0x208] sm:$0xf]
    %v161 = vld [vmem:[%s1 + $0x20c] sm:$0xf]
    %v162 = vld [vmem:[%s1 + $0x210] sm:$0xf]
    %v163 = vld [vmem:[%s1 + $0x214] sm:$0xf]
    %v164 = vld [vmem:[%s1 + $0x218] sm:$0xf]
    %v165 = vld [vmem:[%s1 + $0x21c] sm:$0xf]
    %v166 = vld [vmem:[%s1 + $0x220] sm:$0xf]
    %v167 = vld [vmem:[%s1 + $0x224] sm:$0xf]
    %v168 = vld [vmem:[%s1 + $0x228] sm:$0xf]
    %v169 = vld [vmem:[%s1 + $0x22c] sm:$0xf]
    %v170 = vld [vmem:[%s1 + $0x230] sm:$0xf]
    %v171 = vld [vmem:[%s1 + $0x234] sm:$0xf]
    %v172 = vld [vmem:[%s1 + $0x238] sm:$0xf]
    %v173 = vld [vmem:[%s1 + $0x23c] sm:$0xf]
    %v174 = vld [vmem:[%s1 + $0x240] sm:$0xf]
    %v175 = vld [vmem:[%s1 + $0x244] sm:$0xf]
    %v176 = vld [vmem:[%s1 + $0x248] sm:$0xf]
    %v177 = vld [vmem:[%s1 + $0x24c] sm:$0xf]
    %v178 = vld [vmem:[%s1 + $0x250] sm:$0xf]
    %v179 = vld [vmem:[%s1 + $0x254] sm:$0xf]
    %v180 = vld [vmem:[%s1 + $0x258] sm:$0xf]
    %v181 = vld [vmem:[%s1 + $0x25c] sm:$0xf]
    %v182 = vld [vmem:[%s1 + $0x260] sm:$0xf]
    %v183 = vld [vmem:[%s1 + $0x264] sm:$0xf]
    %v184 = vld [vmem:[%s1 + $0x268] sm:$0xf]
    %v185 = vld [vmem:[%s1 + $0x26c] sm:$0xf]
    %v186 = vld [vmem:[%s1 + $0x270] sm:$0xf]
    %v187 = vld [vmem:[%s1 + $0x274] sm:$0xf]
    %v188 = vld [vmem:[%s1 + $0x278] sm:$0xf]
    %v189 = vld [vmem:[%s1 + $0x27c] sm:$0xf]
    %v190 = vld [vmem:[%s1 + $0x280] sm:$0xf]
    %v191 = vld [vmem:[%s1 + $0x284] sm:$0xf]
    %v192 = vld [vmem:[%s1 + $0x288] sm:$0xf]
    %v193 = vld [vmem:[%s1 + $0x28c] sm:$0xf]
    %v194 = vld [vmem:[%s1 + $0x290] sm:$0xf]
    %v195 = vld [vmem:[%s1 + $0x294] sm:$0xf]
    %v196 = vld [vmem:[%s1 + $0x298] sm:$0xf]
    %v197 = vld [vmem:[%s1 + $0x29c] sm:$0xf]
    %v198 = vld [vmem:[%s1 + $0x2a0] sm:$0xf]
    %v199 = vld [vmem:[%s1 + $0x2a4] sm:$0xf]
    %v200 = vld [vmem:[%s1 + $0x2a8] sm:$0xf]
    %v201 = vld [vmem:[%s1 + $0x2ac] sm:$0xf]
    %v202 = vld [vmem:[%s1 + $0x2b0] sm:$0xf]
    %v203 = vld [vmem:[%s1 + $0x2b4] sm:$0xf]
    %v204 = vld [vmem:[%s1 + $0x2b8] sm:$0xf]
    %v205 = vld [vmem:[%s1 + $0x2bc] sm:$0xf]
    %v206 = vld [vmem:[%s1 + $0x2c0] sm:$0xf]
    %v207 = vld [vmem:[%s1 + $0x2c4] sm:$0xf]
    %v208 = vld [vmem:[%s1 + $0x2c8] sm:$0xf]
    %v209 = vld [vmem:[%s1 + $0x2cc] sm:$0xf]
    %v210 = vld [vmem:[%s1 + $0x2d0] sm:$0xf]
    %v211 = vld [vmem:[%s1 + $0x2d4] sm:$0xf]
    %v212 = vld [vmem:[%s1 + $0x2d8] sm:$0xf]
    %v213 = vld [vmem:[%s1 + $0x2dc] sm:$0xf]
    %v214 = vld [vmem:[%s1 + $0x2e0] sm:$0xf]
    %v215 = vld [vmem:[%s1 + $0x2e4] sm:$0xf]
    %v216 = vld [vmem:[%s1 + $0x2e8] sm:$0xf]
    %v217 = vld [vmem:[%s1 + $0x2ec] sm:$0xf]
    %v218 = vld [vmem:[%s1 + $0x2f0] sm:$0xf]
    %v219 = vld [vmem:[%s1 + $0x2f4] sm:$0xf]
    %v220 = vld [vmem:[%s1 + $0x2f8] sm:$0xf]
    %v221 = vld [vmem:[%s1 + $0x2fc] sm:$0xf]
    %v222 = vld [vmem:[%s1 + $0x300] sm:$0xf]
    %v223 = vld [vmem:[%s1 + $0x304] sm:$0xf]
    %v224 = vld [vmem:[%s1 + $0x308] sm:$0xf]
    %v225 = vld [vmem:[%s1 + $0x30c] sm:$0xf]
    %v226 = vld [vmem:[%s1 + $0x310] sm:$0xf]
    %v227 = vld [vmem:[%s1 + $0x314] sm:$0xf]
    %v228 = vld [vmem:[%s1 + $0x318] sm:$0xf]
    %v229 = vld [vmem:[%s1 + $0x31c] sm:$0xf]
    %v230 = vld [vmem:[%s1 + $0x320] sm:$0xf]
    %v231 = vld [vmem:[%s1 + $0x324] sm:$0xf]
    %v232 = vld [vmem:[%s1 + $0x328] sm:$0xf]
    %v233 = vld [vmem:[%s1 + $0x32c] sm:$0xf]
    %v234 = vld [vmem:[%s1 + $0x330] sm:$0xf]
    %v235 = vld [vmem:[%s1 + $0x334] sm:$0xf]
    %v236 = vld [vmem:[%s1 + $0x338] sm:$0xf]
    %v237 = vld [vmem:[%s1 + $0x33c] sm:$0xf]
    %v238 = vld [vmem:[%s1 + $0x340] sm:$0xf]
    %v239 = vld [vmem:[%s1 + $0x344] sm:$0xf]
    %v240 = vld [vmem:[%s1 + $0x348] sm:$0xf]
    %v241 = vld [vmem:[%s1 + $0x34c] sm:$0xf]
    %v242 = vld [vmem:[%s1 + $0x350] sm:$0xf]
    %v243 = vld [vmem:[%s1 + $0x354] sm:$0xf]
    %v244 = vld [vmem:[%s1 + $0x358] sm:$0xf]
    %v245 = vld [vmem:[%s1 + $0x35c] sm:$0xf]
    %v246 = vld [vmem:[%s1 + $0x360] sm:$0xf]
    %v247 = vld [vmem:[%s1 + $0x364] sm:$0xf]
    %v248 = vld [vmem:[%s1 + $0x368] sm:$0xf]
    %v249 = vld [vmem:[%s1 + $0x36c] sm:$0xf]
    %v250 = vld [vmem:[%s1 + $0x370] sm:$0xf]
    %v251 = vld [vmem:[%s1 + $0x374] sm:$0xf]
    %v252 = vld [vmem:[%s1 + $0x378] sm:$0xf]
    %v253 = vld [vmem:[%s1 + $0x37c] sm:$0xf]
    %v254 = vld [vmem:[%s1 + $0x380] sm:$0xf]
    %v255 = vld [vmem:[%s1 + $0x384] sm:$0xf]
    %v256 = vld [vmem:[%s1 + $0x388] sm:$0xf]
    %v257 = vld [vmem:[%s1 + $0x38c] sm:$0xf]
    %v258 = vld [vmem:[%s1 + $0x390] sm:$0xf]
    %v259 = vld [vmem:[%s1 + $0x394] sm:$0xf]
    %v260 = vld [vmem:[%s1 + $0x398] sm:$0xf]
    %v261 = vld [vmem:[%s1 + $0x39c] sm:$0xf]
    %v262 = vld [vmem:[%s1 + $0x3a0] sm:$0xf]
    %v263 = vld [vmem:[%s1 + $0x3a4] sm:$0xf]
    %v264 = vld [vmem:[%s1 + $0x3a8] sm:$0xf]
    %v265 = vld [vmem:[%s1 + $0x3ac] sm:$0xf]
    %v266 = vld [vmem:[%s1 + $0x3b0] sm:$0xf]
    %v267 = vld [vmem:[%s1 + $0x3b4] sm:$0xf]
    %v268 = vld [vmem:[%s1 + $0x3b8] sm:$0xf]
    %v269 = vld [vmem:[%s1 + $0x3bc] sm:$0xf]
    %v270 = vld [vmem:[%s1 + $0x3c0] sm:$0xf]
    %v271 = vld [vmem:[%s1 + $0x3c4] sm:$0xf]
    %v272 = vld [vmem:[%s1 + $0x3c8] sm:$0xf]
    %v273 = vld [vmem:[%s1 + $0x3cc] sm:$0xf]
    %v274 = vld [vmem:[%s1 + $0x3d0] sm:$0xf]
    %v275 = vld [vmem:[%s1 + $0x3d4] sm:$0xf]
    %v276 = vld [vmem:[%s1 + $0x3d8] sm:$0xf]
    %v277 = vld [vmem:[%s1 + $0x3dc] sm:$0xf]
    %v278 = vld [vmem:[%s1 + $0x3e0] sm:$0xf]
    %v279 = vld [vmem:[%s1 + $0x3e4] sm:$0xf]
    %v280 = vld [vmem:[%s1 + $0x3e8] sm:$0xf]
    %v281 = vld [vmem:[%s1 + $0x3ec] sm:$0xf]
    %v282 = vld [vmem:[%s1 + $0x3f0] sm:$0xf]
    %v283 = vld [vmem:[%s1 + $0x3f4] sm:$0xf]
    %v284 = vld [vmem:[%s1 + $0x3f8] sm:$0xf]
    %v285 = vld [vmem:[%s1 + $0x3fc] sm:$0xf]
    %v286 = vld [vmem:[%s1 + $0x400] sm:$0xf]
    %v287 = vld [vmem:[%s1 + $0x404] sm:$0xf]
    %v288 = vld [vmem:[%s1 + $0x408] sm:$0xf]
    %v289 = vld [vmem:[%s1 + $0x40c] sm:$0xf]
    %v290 = vld [vmem:[%s1 + $0x410] sm:$0xf]
    %v291 = vld [vmem:[%s1 + $0x414] sm:$0xf]
    %v292 = vld [vmem:[%s1 + $0x418] sm:$0xf]
    %v293 = vld [vmem:[%s1 + $0x41c] sm:$0xf]
    %v294 = vld [vmem:[%s1 + $0x420] sm:$0xf]
    %v295 = vld [vmem:[%s1 + $0x424] sm:$0xf]
    %v296 = vld [vmem:[%s1 + $0x428] sm:$0xf]
    %v297 = vld [vmem:[%s1 + $0x42c] sm:$0xf]
    %v298 = vld [vmem:[%s1 + $0x430] sm:$0xf]
    %v299 = vld [vmem:[%s1 + $0x434] sm:$0xf]
    %v300 = vld [vmem:[%s1 + $0x438] sm:$0xf]
    %v301 = vld [vmem:[%s1 + $0x43c] sm:$0xf]
    %v302 = vld [vmem:[%s1 + $0x440] sm:$0xf]
    %v303 = vld [vmem:[%s1 + $0x444] sm:$0xf]
    %v304 = vld [vmem:[%s1 + $0x448] sm:$0xf]
    %v305 = vld [vmem:[%s1 + $0x44c] sm:$0xf]
    %v306 = vld [vmem:[%s1 + $0x450] sm:$0xf]
    %v307 = vld [vmem:[%s1 + $0x454] sm:$0xf]
    %v308 = vld [vmem:[%s1 + $0x458] sm:$0xf]
    %v309 = vld [vmem:[%s1 + $0x45c] sm:$0xf]
    %v310 = vld [vmem:[%s1 + $0x460] sm:$0xf]
    %v311 = vld [vmem:[%s1 + $0x464] sm:$0xf]
    %v312 = vld [vmem:[%s1 + $0x468] sm:$0xf]
    %v313 = vld [vmem:[%s1 + $0x46c] sm:$0xf]
    %v314 = vld [vmem:[%s1 + $0x470] sm:$0xf]
    %v315 = vld [vmem:[%s1 + $0x474] sm:$0xf]
    %v316 = vld [vmem:[%s1 + $0x478] sm:$0xf]
    %v317 = vld [vmem:[%s1 + $0x47c] sm:$0xf]
    %v318 = vld [vmem:[%s1 + $0x480] sm:$0xf]
    %v319 = vld [vmem:[%s1 + $0x484] sm:$0xf]
    %v320 = vld [vmem:[%s1 + $0x488] sm:$0xf]
    %v321 = vld [vmem:[%s1 + $0x48c] sm:$0xf]
    %v322 = vld [vmem:[%s1 + $0x490] sm:$0xf]
    %v323 = vld [vmem:[%s1 + $0x494] sm:$0xf]
    %v324 = vld [vmem:[%s1 + $0x498] sm:$0xf]
    %v325 = vld [vmem:[%s1 + $0x49c] sm:$0xf]
    %v326 = vld [vmem:[%s1 + $0x4a0] sm:$0xf]
    %v327 = vld [vmem:[%s1 + $0x4a4] sm:$0xf]
    %v328 = vld [vmem:[%s1 + $0x4a8] sm:$0xf]
    %v329 = vld [vmem:[%s1 + $0x4ac] sm:$0xf]
    %v330 = vld [vmem:[%s1 + $0x4b0] sm:$0xf]
    %v331 = vld [vmem:[%s1 + $0x4b4] sm:$0xf]
    %v332 = vld [vmem:[%s1 + $0x4b8] sm:$0xf]
    %v333 = vld [vmem:[%s1 + $0x4bc] sm:$0xf]
    %v334 = vld [vmem:[%s1 + $0x4c0] sm:$0xf]
    %v335 = vld [vmem:[%s1 + $0x4c4] sm:$0xf]
    %v336 = vld [vmem:[%s1 + $0x4c8] sm:$0xf]
    %v337 = vld [vmem:[%s1 + $0x4cc] sm:$0xf]
    %v338 = vld [vmem:[%s1 + $0x4d0] sm:$0xf]
    %v339 = vld [vmem:[%s1 + $0x4d4] sm:$0xf]
    %v340 = vld [vmem:[%s1 + $0x4d8] sm:$0xf]
    %v341 = vld [vmem:[%s1 + $0x4dc] sm:$0xf]
    %v342 = vld [vmem:[%s1 + $0x4e0] sm:$0xf]
    %v343 = vld [vmem:[%s1 + $0x4e4] sm:$0xf]
    %v344 = vld [vmem:[%s1 + $0x4e8] sm:$0xf]
    %v345 = vld [vmem:[%s1 + $0x4ec] sm:$0xf]
    %v346 = vld [vmem:[%s1 + $0x4f0] sm:$0xf]
    %v347 = vld [vmem:[%s1 + $0x4f4] sm:$0xf]
    %v348 = vld [vmem:[%s1 + $0x4f8] sm:$0xf]
    %v349 = vld [vmem:[%s1 + $0x4fc] sm:$0xf]
    %v350 = vld [vmem:[%s1 + $0x500] sm:$0xf]
    %v351 = vld [vmem:[%s1 + $0x504] sm:$0xf]
    %v352 = vld [vmem:[%s1 + $0x508] sm:$0xf]
    %v353 = vld [vmem:[%s1 + $0x50c] sm:$0xf]
    %v354 = vld [vmem:[%s1 + $0x510] sm:$0xf]
    %v355 = vld [vmem:[%s1 + $0x514] sm:$0xf]
    %v356 = vld [vmem:[%s1 + $0x518] sm:$0xf]
    %v357 = vld [vmem:[%s1 + $0x51c] sm:$0xf]
    %v358 = vld [vmem:[%s1 + $0x520] sm:$0xf]
    %v359 = vld [vmem:[%s1 + $0x524] sm:$0xf]
    %v360 = vld [vmem:[%s1 + $0x528] sm:$0xf]
    %v361 = vld [vmem:[%s1 + $0x52c] sm:$0xf]
    %v362 = vld [vmem:[%s1 + $0x530] sm:$0xf]
    %v363 = vld [vmem:[%s1 + $0x534] sm:$0xf]
    %v364 = vld [vmem:[%s1 + $0x538] sm:$0xf]
    %v365 = vld [vmem:[%s1 + $0x53c] sm:$0xf]
    %v366 = vld [vmem:[%s1 + $0x540] sm:$0xf]
    %v367 = vld [vmem:[%s1 + $0x544] sm:$0xf]
    %v368 = vld [vmem:[%s1 + $0x548] sm:$0xf]
    %v369 = vld [vmem:[%s1 + $0x54c] sm:$0xf]
    %v370 = vld [vmem:[%s1 + $0x550] sm:$0xf]
    %v371 = vld [vmem:[%s1 + $0x554] sm:$0xf]
    %v372 = vld [vmem:[%s1 + $0x558] sm:$0xf]
    %v373 = vld [vmem:[%s1 + $0x55c] sm:$0xf]
    %v374 = vld [vmem:[%s1 + $0x560] sm:$0xf]
    %v375 = vld [vmem:[%s1 + $0x564] sm:$0xf]
    %v376 = vld [vmem:[%s1 + $0x568] sm:$0xf]
    %v377 = vld [vmem:[%s1 + $0x56c] sm:$0xf]
    %v378 = vld [vmem:[%s1 + $0x570] sm:$0xf]
    %v379 = vld [vmem:[%s1 + $0x574] sm:$0xf]
    %v380 = vld [vmem:[%s1 + $0x578] sm:$0xf]
    %v381 = vld [vmem:[%s1 + $0x57c] sm:$0xf]
    %v382 = vld [vmem:[%s1 + $0x580] sm:$0xf]
    %v383 = vld [vmem:[%s1 + $0x584] sm:$0xf]
    %v384 = vld [vmem:[%s1 + $0x588] sm:$0xf]
    %v385 = vld [vmem:[%s1 + $0x58c] sm:$0xf]
    %v386 = vld [vmem:[%s1 + $0x590] sm:$0xf]
    %v387 = vld [vmem:[%s1 + $0x594] sm:$0xf]
    %v388 = vld [vmem:[%s1 + $0x598] sm:$0xf]
    %v389 = vld [vmem:[%s1 + $0x59c] sm:$0xf]
    %v390 = vld [vmem:[%s1 + $0x5a0] sm:$0xf]
    %v391 = vld [vmem:[%s1 + $0x5a4] sm:$0xf]
    %v392 = vld [vmem:[%s1 + $0x5a8] sm:$0xf]
    %v393 = vld [vmem:[%s1 + $0x5ac] sm:$0xf]
    %v394 = vld [vmem:[%s1 + $0x5b0] sm:$0xf]
    %v395 = vld [vmem:[%s1 + $0x5b4] sm:$0xf]
    %v396 = vld [vmem:[%s1 + $0x5b8] sm:$0xf]
    %v397 = vld [vmem:[%s1 + $0x5bc] sm:$0xf]
    %v398 = vld [vmem:[%s1 + $0x5c0] sm:$0xf]
    %v399 = vld [vmem:[%s1 + $0x5c4] sm:$0xf]
    %v400 = vld [vmem:[%s1 + $0x5c8] sm:$0xf]
    %v401 = vld [vmem:[%s1 + $0x5cc] sm:$0xf]
    %v402 = vld [vmem:[%s1 + $0x5d0] sm:$0xf]
    %v403 = vld [vmem:[%s1 + $0x5d4] sm:$0xf]
    %v404 = vld [vmem:[%s1 + $0x5d8] sm:$0xf]
    %v405 = vld [vmem:[%s1 + $0x5dc] sm:$0xf]
    %v406 = vld [vmem:[%s1 + $0x5e0] sm:$0xf]
    %v407 = vld [vmem:[%s1 + $0x5e4] sm:$0xf]
    %v408 = vld [vmem:[%s1 + $0x5e8] sm:$0xf]
    %v409 = vld [vmem:[%s1 + $0x5ec] sm:$0xf]
    %v410 = vld [vmem:[%s1 + $0x5f0] sm:$0xf]
    %v411 = vld [vmem:[%s1 + $0x5f4] sm:$0xf]
    %v412 = vld [vmem:[%s1 + $0x5f8] sm:$0xf]
    %v413 = vld [vmem:[%s1 + $0x5fc] sm:$0xf]
    %v414 = vld [vmem:[%s1 + $0x600] sm:$0xf]
    %v415 = vld [vmem:[%s1 + $0x604] sm:$0xf]
    %v416 = vld [vmem:[%s1 + $0x608] sm:$0xf]
    %v417 = vld [vmem:[%s1 + $0x60c] sm:$0xf]
    %v418 = vld [vmem:[%s1 + $0x610] sm:$0xf]
    %v419 = vld [vmem:[%s1 + $0x614] sm:$0xf]
    %v420 = vld [vmem:[%s1 + $0x618] sm:$0xf]
    %v421 = vld [vmem:[%s1 + $0x61c] sm:$0xf]
    %v422 = vld [vmem:[%s1 + $0x620] sm:$0xf]
    %v423 = vld [vmem:[%s1 + $0x624] sm:$0xf]
    %v424 = vld [vmem:[%s1 + $0x628] sm:$0xf]
    %v425 = vld [vmem:[%s1 + $0x62c] sm:$0xf]
    %v426 = vld [vmem:[%s1 + $0x630] sm:$0xf]
    %v427 = vld [vmem:[%s1 + $0x634] sm:$0xf]
    %v428 = vld [vmem:[%s1 + $0x638] sm:$0xf]
    %v429 = vld [vmem:[%s1 + $0x63c] sm:$0xf]
    %v430 = vld [vmem:[%s1 + $0x640] sm:$0xf]
    %v431 = vld [vmem:[%s1 + $0x644] sm:$0xf]
    %v432 = vld [vmem:[%s1 + $0x648] sm:$0xf]
    %v433 = vld [vmem:[%s1 + $0x64c] sm:$0xf]
    %v434 = vld [vmem:[%s1 + $0x650] sm:$0xf]
    %v435 = vld [vmem:[%s1 + $0x654] sm:$0xf]
    %v436 = vld [vmem:[%s1 + $0x658] sm:$0xf]
    %v437 = vld [vmem:[%s1 + $0x65c] sm:$0xf]
    %v438 = vld [vmem:[%s1 + $0x660] sm:$0xf]
    %v439 = vld [vmem:[%s1 + $0x664] sm:$0xf]
    %v440 = vld [vmem:[%s1 + $0x668] sm:$0xf]
    %v441 = vld [vmem:[%s1 + $0x66c] sm:$0xf]
    %v442 = vld [vmem:[%s1 + $0x670] sm:$0xf]
    %v443 = vld [vmem:[%s1 + $0x674] sm:$0xf]
    %v444 = vld [vmem:[%s1 + $0x678] sm:$0xf]
    %v445 = vld [vmem:[%s1 + $0x67c] sm:$0xf]
    %v446 = vld [vmem:[%s1 + $0x680] sm:$0xf]
    %v447 = vld [vmem:[%s1 + $0x684] sm:$0xf]
    %v448 = vld [vmem:[%s1 + $0x688] sm:$0xf]
    %v449 = vld [vmem:[%s1 + $0x68c] sm:$0xf]
    %v450 = vld [vmem:[%s1 + $0x690] sm:$0xf]
    %v451 = vld [vmem:[%s1 + $0x694] sm:$0xf]
    %v452 = vld [vmem:[%s1 + $0x698] sm:$0xf]
    %v453 = vld [vmem:[%s1 + $0x69c] sm:$0xf]
    %v454 = vld [vmem:[%s1 + $0x6a0] sm:$0xf]
    %v455 = vld [vmem:[%s1 + $0x6a4] sm:$0xf]
    %v456 = vld [vmem:[%s1 + $0x6a8] sm:$0xf]
    %v457 = vld [vmem:[%s1 + $0x6ac] sm:$0xf]
    %v458 = vld [vmem:[%s1 + $0x6b0] sm:$0xf]
    %v459 = vld [vmem:[%s1 + $0x6b4] sm:$0xf]
    %v460 = vld [vmem:[%s1 + $0x6b8] sm:$0xf]
    %v461 = vld [vmem:[%s1 + $0x6bc] sm:$0xf]
    %v462 = vld [vmem:[%s1 + $0x6c0] sm:$0xf]
    %v463 = vld [vmem:[%s1 + $0x6c4] sm:$0xf]
    %v464 = vld [vmem:[%s1 + $0x6c8] sm:$0xf]
    %v465 = vld [vmem:[%s1 + $0x6cc] sm:$0xf]
    %v466 = vld [vmem:[%s1 + $0x6d0] sm:$0xf]
    %v467 = vld [vmem:[%s1 + $0x6d4] sm:$0xf]
    %v468 = vld [vmem:[%s1 + $0x6d8] sm:$0xf]
    %v469 = vld [vmem:[%s1 + $0x6dc] sm:$0xf]
    %v470 = vld [vmem:[%s1 + $0x6e0] sm:$0xf]
    %v471 = vld [vmem:[%s1 + $0x6e4] sm:$0xf]
    %v472 = vld [vmem:[%s1 + $0x6e8] sm:$0xf]
    %v473 = vld [vmem:[%s1 + $0x6ec] sm:$0xf]
    %v474 = vld [vmem:[%s1 + $0x6f0] sm:$0xf]
    %v475 = vld [vmem:[%s1 + $0x6f4] sm:$0xf]
    %v476 = vld [vmem:[%s1 + $0x6f8] sm:$0xf]
    %v477 = vld [vmem:[%s1 + $0x6fc] sm:$0xf]
    %v478 = vld [vmem:[%s1 + $0x700] sm:$0xf]
    %v479 = vld [vmem:[%s1 + $0x704] sm:$0xf]
    %v480 = vld [vmem:[%s1 + $0x708] sm:$0xf]
    %v481 = vld [vmem:[%s1 + $0x70c] sm:$0xf]
    %v482 = vld [vmem:[%s1 + $0x710] sm:$0xf]
    %v483 = vld [vmem:[%s1 + $0x714] sm:$0xf]
    %v484 = vld [vmem:[%s1 + $0x718] sm:$0xf]
    %v485 = vld [vmem:[%s1 + $0x71c] sm:$0xf]
    %v486 = vld [vmem:[%s1 + $0x720] sm:$0xf]
    %v487 = vld [vmem:[%s1 + $0x724] sm:$0xf]
    %v488 = vld [vmem:[%s1 + $0x728] sm:$0xf]
    %v489 = vld [vmem:[%s1 + $0x72c] sm:$0xf]
    %v490 = vld [vmem:[%s1 + $0x730] sm:$0xf]
    %v491 = vld [vmem:[%s1 + $0x734] sm:$0xf]
    %v492 = vld [vmem:[%s1 + $0x738] sm:$0xf]
    %v493 = vld [vmem:[%s1 + $0x73c] sm:$0xf]
    %v494 = vld [vmem:[%s1 + $0x740] sm:$0xf]
    %v495 = vld [vmem:[%s1 + $0x744] sm:$0xf]
    %v496 = vld [vmem:[%s1 + $0x748] sm:$0xf]
    %v497 = vld [vmem:[%s1 + $0x74c] sm:$0xf]
    %v498 = vld [vmem:[%s1 + $0x750] sm:$0xf]
    %v499 = vld [vmem:[%s1 + $0x754] sm:$0xf]
    %v500 = vld [vmem:[%s1 + $0x758] sm:$0xf]
    %v501 = vld [vmem:[%s1 + $0x75c] sm:$0xf]
    %v502 = vld [vmem:[%s1 + $0x760] sm:$0xf]
    %v503 = vld [vmem:[%s1 + $0x764] sm:$0xf]
    %v504 = vld [vmem:[%s1 + $0x768] sm:$0xf]
    %v505 = vld [vmem:[%s1 + $0x76c] sm:$0xf]
    %v506 = vld [vmem:[%s1 + $0x770] sm:$0xf]
    %v507 = vld [vmem:[%s1 + $0x774] sm:$0xf]
    %v508 = vld [vmem:[%s1 + $0x778] sm:$0xf]
    %v509 = vld [vmem:[%s1 + $0x77c] sm:$0xf]
    %v510 = vld [vmem:[%s1 + $0x780] sm:$0xf]
    %v511 = vld [vmem:[%s1 + $0x784] sm:$0xf]
    %v512 = vld [vmem:[%s1 + $0x788] sm:$0xf]
    %v513 = vld [vmem:[%s1 + $0x78c] sm:$0xf]
    %v514 = vld [vmem:[%s1 + $0x790] sm:$0xf]
    %v515 = vld [vmem:[%s1 + $0x794] sm:$0xf]
    %v516 = vld [vmem:[%s1 + $0x798] sm:$0xf]
    %v517 = vld [vmem:[%s1 + $0x79c] sm:$0xf]
    %v518 = vld [vmem:[%s1 + $0x7a0] sm:$0xf]
    %v519 = vld [vmem:[%s1 + $0x7a4] sm:$0xf]
    %v520 = vld [vmem:[%s1 + $0x7a8] sm:$0xf]
    %v521 = vld [vmem:[%s1 + $0x7ac] sm:$0xf]
    %v522 = vld [vmem:[%s1 + $0x7b0] sm:$0xf]
    %v523 = vld [vmem:[%s1 + $0x7b4] sm:$0xf]
    %v524 = vld [vmem:[%s1 + $0x7b8] sm:$0xf]
    %v525 = vld [vmem:[%s1 + $0x7bc] sm:$0xf]
    %v526 = vld [vmem:[%s1 + $0x7c0] sm:$0xf]
    %v527 = vld [vmem:[%s1 + $0x7c4] sm:$0xf]
    %v528 = vld [vmem:[%s1 + $0x7c8] sm:$0xf]
    %v529 = vld [vmem:[%s1 + $0x7cc] sm:$0xf]
    %v530 = vld [vmem:[%s1 + $0x7d0] sm:$0xf]
    %v531 = vld [vmem:[%s1 + $0x7d4] sm:$0xf]
    %v532 = vld [vmem:[%s1 + $0x7d8] sm:$0xf]
    %v533 = vld [vmem:[%s1 + $0x7dc] sm:$0xf]
    %v534 = vld [vmem:[%s1 + $0x7e0] sm:$0xf]
    %v535 = vld [vmem:[%s1 + $0x7e4] sm:$0xf]
    %v536 = vld [vmem:[%s1 + $0x7e8] sm:$0xf]
    %v537 = vld [vmem:[%s1 + $0x7ec] sm:$0xf]
    %v538 = vld [vmem:[%s1 + $0x7f0] sm:$0xf]
    %v539 = vld [vmem:[%s1 + $0x7f4] sm:$0xf]
    %v540 = vld [vmem:[%s1 + $0x7f8] sm:$0xf]
    %v541 = vld [vmem:[%s1 + $0x7fc] sm:$0xf]
    %v542 = vld [vmem:[%s1 + $0x800] sm:$0xf]
    %v543 = vld [vmem:[%s1 + $0x804] sm:$0xf]
    %v544 = vld [vmem:[%s1 + $0x808] sm:$0xf]
    %v545 = vld [vmem:[%s1 + $0x80c] sm:$0xf]
    %v546 = vld [vmem:[%s1 + $0x810] sm:$0xf]
    %v547 = vld [vmem:[%s1 + $0x814] sm:$0xf]
    %v548 = vld [vmem:[%s1 + $0x818] sm:$0xf]
    %v549 = vld [vmem:[%s1 + $0x81c] sm:$0xf]
    %v550 = vld [vmem:[%s1 + $0x820] sm:$0xf]
    %v551 = vld [vmem:[%s1 + $0x824] sm:$0xf]
    %v552 = vld [vmem:[%s1 + $0x828] sm:$0xf]
    %v553 = vld [vmem:[%s1 + $0x82c] sm:$0xf]
    %v554 = vld [vmem:[%s1 + $0x830] sm:$0xf]
    %v555 = vld [vmem:[%s1 + $0x834] sm:$0xf]
    %v556 = vld [vmem:[%s1 + $0x838] sm:$0xf]
    %v557 = vld [vmem:[%s1 + $0x83c] sm:$0xf]
    %v558 = vld [vmem:[%s1 + $0x840] sm:$0xf]
    %v559 = vld [vmem:[%s1 + $0x844] sm:$0xf]
    %v560 = vld [vmem:[%s1 + $0x848] sm:$0xf]
    %v561 = vld [vmem:[%s1 + $0x84c] sm:$0xf]
    %v562 = vld [vmem:[%s1 + $0x850] sm:$0xf]
    %v563 = vld [vmem:[%s1 + $0x854] sm:$0xf]
    %v564 = vld [vmem:[%s1 + $0x858] sm:$0xf]
    %v565 = vld [vmem:[%s1 + $0x85c] sm:$0xf]
    %v566 = vld [vmem:[%s1 + $0x860] sm:$0xf]
    %v567 = vld [vmem:[%s1 + $0x864] sm:$0xf]
    %v568 = vld [vmem:[%s1 + $0x868] sm:$0xf]
    %v569 = vld [vmem:[%s1 + $0x86c] sm:$0xf]
    %v570 = vld [vmem:[%s1 + $0x870] sm:$0xf]
    %v571 = vld [vmem:[%s1 + $0x874] sm:$0xf]
    %v572 = vld [vmem:[%s1 + $0x878] sm:$0xf]
    %v573 = vld [vmem:[%s1 + $0x87c] sm:$0xf]
    %v574 = vld [vmem:[%s1 + $0x880] sm:$0xf]
    %v575 = vld [vmem:[%s1 + $0x884] sm:$0xf]
    %v576 = vld [vmem:[%s1 + $0x888] sm:$0xf]
    %v577 = vld [vmem:[%s1 + $0x88c] sm:$0xf]
    %v578 = vld [vmem:[%s1 + $0x890] sm:$0xf]
    %v579 = vld [vmem:[%s1 + $0x894] sm:$0xf]
    %v580 = vld [vmem:[%s1 + $0x898] sm:$0xf]
    %v581 = vld [vmem:[%s1 + $0x89c] sm:$0xf]
    %v582 = vld [vmem:[%s1 + $0x8a0] sm:$0xf]
    %v583 = vld [vmem:[%s1 + $0x8a4] sm:$0xf]
    %v584 = vld [vmem:[%s1 + $0x8a8] sm:$0xf]
    %v585 = vld [vmem:[%s1 + $0x8ac] sm:$0xf]
    %v586 = vld [vmem:[%s1 + $0x8b0] sm:$0xf]
    %v587 = vld [vmem:[%s1 + $0x8b4] sm:$0xf]
    %v588 = vld [vmem:[%s1 + $0x8b8] sm:$0xf]
    %v589 = vld [vmem:[%s1 + $0x8bc] sm:$0xf]
    %v590 = vld [vmem:[%s1 + $0x8c0] sm:$0xf]
    %v591 = vld [vmem:[%s1 + $0x8c4] sm:$0xf]
    %v592 = vld [vmem:[%s1 + $0x8c8] sm:$0xf]
    %v593 = vld [vmem:[%s1 + $0x8cc] sm:$0xf]
    %v594 = vld [vmem:[%s1 + $0x8d0] sm:$0xf]
    %v595 = vld [vmem:[%s1 + $0x8d4] sm:$0xf]
    %v596 = vld [vmem:[%s1 + $0x8d8] sm:$0xf]
    %v597 = vld [vmem:[%s1 + $0x8dc] sm:$0xf]
    %v598 = vld [vmem:[%s1 + $0x8e0] sm:$0xf]
    %v599 = vld [vmem:[%s1 + $0x8e4] sm:$0xf]
    %v600 = vld [vmem:[%s1 + $0x8e8] sm:$0xf]
    %v601 = vld [vmem:[%s1 + $0x8ec] sm:$0xf]
    %v602 = vld [vmem:[%s1 + $0x8f0] sm:$0xf]
    %v603 = vld [vmem:[%s1 + $0x8f4] sm:$0xf]
    %v604 = vld [vmem:[%s1 + $0x8f8] sm:$0xf]
    %v605 = vld [vmem:[%s1 + $0x8fc] sm:$0xf]
    %v606 = vld [vmem:[%s1 + $0x900] sm:$0xf]
    %v607 = vld [vmem:[%s1 + $0x904] sm:$0xf]
    %v608 = vld [vmem:[%s1 + $0x908] sm:$0xf]
    %v609 = vld [vmem:[%s1 + $0x90c] sm:$0xf]
    %v610 = vld [vmem:[%s1 + $0x910] sm:$0xf]
    %v611 = vld [vmem:[%s1 + $0x914] sm:$0xf]
    %v612 = vld [vmem:[%s1 + $0x918] sm:$0xf]
    %v613 = vld [vmem:[%s1 + $0x91c] sm:$0xf]
    %v614 = vld [vmem:[%s1 + $0x920] sm:$0xf]
    %v615 = vld [vmem:[%s1 + $0x924] sm:$0xf]
    %v616 = vld [vmem:[%s1 + $0x928] sm:$0xf]
    %v617 = vld [vmem:[%s1 + $0x92c] sm:$0xf]
    %v618 = vld [vmem:[%s1 + $0x930] sm:$0xf]
    %v619 = vld [vmem:[%s1 + $0x934] sm:$0xf]
    %v620 = vld [vmem:[%s1 + $0x938] sm:$0xf]
    %v621 = vld [vmem:[%s1 + $0x93c] sm:$0xf]
    %v622 = vld [vmem:[%s1 + $0x940] sm:$0xf]
    %v623 = vld [vmem:[%s1 + $0x944] sm:$0xf]
    %v624 = vld [vmem:[%s1 + $0x948] sm:$0xf]
    %v625 = vld [vmem:[%s1 + $0x94c] sm:$0xf]
    %v626 = vld [vmem:[%s1 + $0x950] sm:$0xf]
    %v627 = vld [vmem:[%s1 + $0x954] sm:$0xf]
    %v628 = vld [vmem:[%s1 + $0x958] sm:$0xf]
    %v629 = vld [vmem:[%s1 + $0x95c] sm:$0xf]
    %v630 = vld [vmem:[%s1 + $0x960] sm:$0xf]
    %v631 = vld [vmem:[%s1 + $0x964] sm:$0xf]
    %v632 = vld [vmem:[%s1 + $0x968] sm:$0xf]
    %v633 = vld [vmem:[%s1 + $0x96c] sm:$0xf]
    %v634 = vld [vmem:[%s1 + $0x970] sm:$0xf]
    %v635 = vld [vmem:[%s1 + $0x974] sm:$0xf]
    %v636 = vld [vmem:[%s1 + $0x978] sm:$0xf]
    %v637 = vld [vmem:[%s1 + $0x97c] sm:$0xf]
    %v638 = vld [vmem:[%s1 + $0x980] sm:$0xf]
    %v639 = vld [vmem:[%s1 + $0x984] sm:$0xf]
    %v640 = vld [vmem:[%s1 + $0x988] sm:$0xf]
    %v641 = vld [vmem:[%s1 + $0x98c] sm:$0xf]
    %v642 = vld [vmem:[%s1 + $0x990] sm:$0xf]
    %v643 = vld [vmem:[%s1 + $0x994] sm:$0xf]
    %v644 = vld [vmem:[%s1 + $0x998] sm:$0xf]
    %v645 = vld [vmem:[%s1 + $0x99c] sm:$0xf]
    %v646 = vld [vmem:[%s1 + $0x9a0] sm:$0xf]
    %v647 = vld [vmem:[%s1 + $0x9a4] sm:$0xf]
    %v648 = vld [vmem:[%s1 + $0x9a8] sm:$0xf]
    %v649 = vld [vmem:[%s1 + $0x9ac] sm:$0xf]
    %v650 = vld [vmem:[%s1 + $0x9b0] sm:$0xf]
    %v651 = vld [vmem:[%s1 + $0x9b4] sm:$0xf]
    %v652 = vld [vmem:[%s1 + $0x9b8] sm:$0xf]
    %v653 = vld [vmem:[%s1 + $0x9bc] sm:$0xf]
    %v654 = vld [vmem:[%s1 + $0x9c0] sm:$0xf]
    %v655 = vld [vmem:[%s1 + $0x9c4] sm:$0xf]
    %v656 = vld [vmem:[%s1 + $0x9c8] sm:$0xf]
    %v657 = vld [vmem:[%s1 + $0x9cc] sm:$0xf]
    %v658 = vld [vmem:[%s1 + $0x9d0] sm:$0xf]
    %v659 = vld [vmem:[%s1 + $0x9d4] sm:$0xf]
    %v660 = vld [vmem:[%s1 + $0x9d8] sm:$0xf]
    %v661 = vld [vmem:[%s1 + $0x9dc] sm:$0xf]
    %v662 = vld [vmem:[%s1 + $0x9e0] sm:$0xf]
    %v663 = vld [vmem:[%s1 + $0x9e4] sm:$0xf]
    %v664 = vld [vmem:[%s1 + $0x9e8] sm:$0xf]
    %v665 = vld [vmem:[%s1 + $0x9ec] sm:$0xf]
    %v666 = vld [vmem:[%s1 + $0x9f0] sm:$0xf]
    %v667 = vld [vmem:[%s1 + $0x9f4] sm:$0xf]
    %v668 = vld [vmem:[%s1 + $0x9f8] sm:$0xf]
    %v669 = vld [vmem:[%s1 + $0x9fc] sm:$0xf]
    %v670 = vld [vmem:[%s1 + $0xa00] sm:$0xf]
    %v671 = vld [vmem:[%s1 + $0xa04] sm:$0xf]
    %v672 = vld [vmem:[%s1 + $0xa08] sm:$0xf]
    %v673 = vld [vmem:[%s1 + $0xa0c] sm:$0xf]
    %v674 = vld [vmem:[%s1 + $0xa10] sm:$0xf]
    %v675 = vld [vmem:[%s1 + $0xa14] sm:$0xf]
    %v676 = vld [vmem:[%s1 + $0xa18] sm:$0xf]
    %v677 = vld [vmem:[%s1 + $0xa1c] sm:$0xf]
    %v678 = vld [vmem:[%s1 + $0xa20] sm:$0xf]
    %v679 = vld [vmem:[%s1 + $0xa24] sm:$0xf]
    %v680 = vld [vmem:[%s1 + $0xa28] sm:$0xf]
    %v681 = vld [vmem:[%s1 + $0xa2c] sm:$0xf]
    %v682 = vld [vmem:[%s1 + $0xa30] sm:$0xf]
    %v683 = vld [vmem:[%s1 + $0xa34] sm:$0xf]
    %v684 = vld [vmem:[%s1 + $0xa38] sm:$0xf]
    %v685 = vld [vmem:[%s1 + $0xa3c] sm:$0xf]
    %v686 = vld [vmem:[%s1 + $0xa40] sm:$0xf]
    %v687 = vld [vmem:[%s1 + $0xa44] sm:$0xf]
    %v688 = vld [vmem:[%s1 + $0xa48] sm:$0xf]
    %v689 = vld [vmem:[%s1 + $0xa4c] sm:$0xf]
    %v690 = vld [vmem:[%s1 + $0xa50] sm:$0xf]
    %v691 = vld [vmem:[%s1 + $0xa54] sm:$0xf]
    %v692 = vld [vmem:[%s1 + $0xa58] sm:$0xf]
    %v693 = vld [vmem:[%s1 + $0xa5c] sm:$0xf]
    %v694 = vld [vmem:[%s1 + $0xa60] sm:$0xf]
    %v695 = vld [vmem:[%s1 + $0xa64] sm:$0xf]
    %v696 = vld [vmem:[%s1 + $0xa68] sm:$0xf]
    %v697 = vld [vmem:[%s1 + $0xa6c] sm:$0xf]
    %v698 = vld [vmem:[%s1 + $0xa70] sm:$0xf]
    %v699 = vld [vmem:[%s1 + $0xa74] sm:$0xf]
    %v700 = vld [vmem:[%s1 + $0xa78] sm:$0xf]
    %v701 = vld [vmem:[%s1 + $0xa7c] sm:$0xf]
    %v702 = vld [vmem:[%s1 + $0xa80] sm:$0xf]
    %v703 = vld [vmem:[%s1 + $0xa84] sm:$0xf]
    %v704 = vld [vmem:[%s1 + $0xa88] sm:$0xf]
    %v705 = vld [vmem:[%s1 + $0xa8c] sm:$0xf]
    %v706 = vld [vmem:[%s1 + $0xa90] sm:$0xf]
    %v707 = vld [vmem:[%s1 + $0xa94] sm:$0xf]
    %v708 = vld [vmem:[%s1 + $0xa98] sm:$0xf]
    %v709 = vld [vmem:[%s1 + $0xa9c] sm:$0xf]
    %v710 = vld [vmem:[%s1 + $0xaa0] sm:$0xf]
    %v711 = vld [vmem:[%s1 + $0xaa4] sm:$0xf]
    %v712 = vld [vmem:[%s1 + $0xaa8] sm:$0xf]
    %v713 = vld [vmem:[%s1 + $0xaac] sm:$0xf]
    %v714 = vld [vmem:[%s1 + $0xab0] sm:$0xf]
    %v715 = vld [vmem:[%s1 + $0xab4] sm:$0xf]
    %v716 = vld [vmem:[%s1 + $0xab8] sm:$0xf]
    %v717 = vld [vmem:[%s1 + $0xabc] sm:$0xf]
    %v718 = vld [vmem:[%s1 + $0xac0] sm:$0xf]
    %v719 = vld [vmem:[%s1 + $0xac4] sm:$0xf]
    %v720 = vld [vmem:[%s1 + $0xac8] sm:$0xf]
    %v721 = vld [vmem:[%s1 + $0xacc] sm:$0xf]
    %v722 = vld [vmem:[%s1 + $0xad0] sm:$0xf]
    %v723 = vld [vmem:[%s1 + $0xad4] sm:$0xf]
    %v724 = vld [vmem:[%s1 + $0xad8] sm:$0xf]
    %v725 = vld [vmem:[%s1 + $0xadc] sm:$0xf]
    %v726 = vld [vmem:[%s1 + $0xae0] sm:$0xf]
    %v727 = vld [vmem:[%s1 + $0xae4] sm:$0xf]
    %v728 = vld [vmem:[%s1 + $0xae8] sm:$0xf]
    %v729 = vld [vmem:[%s1 + $0xaec] sm:$0xf]
    %v730 = vld [vmem:[%s1 + $0xaf0] sm:$0xf]
    %v731 = vld [vmem:[%s1 + $0xaf4] sm:$0xf]
    %v732 = vld [vmem:[%s1 + $0xaf8] sm:$0xf]
    %v733 = vld [vmem:[%s1 + $0xafc] sm:$0xf]
    %v734 = vld [vmem:[%s1 + $0xb00] sm:$0xf]
    %v735 = vld [vmem:[%s1 + $0xb04] sm:$0xf]
    %v736 = vld [vmem:[%s1 + $0xb08] sm:$0xf]
    %v737 = vld [vmem:[%s1 + $0xb0c] sm:$0xf]
    %v738 = vld [vmem:[%s1 + $0xb10] sm:$0xf]
    %v739 = vld [vmem:[%s1 + $0xb14] sm:$0xf]
    %v740 = vld [vmem:[%s1 + $0xb18] sm:$0xf]
    %v741 = vld [vmem:[%s1 + $0xb1c] sm:$0xf]
    %v742 = vld [vmem:[%s1 + $0xb20] sm:$0xf]
    %v743 = vld [vmem:[%s1 + $0xb24] sm:$0xf]
    %v744 = vld [vmem:[%s1 + $0xb28] sm:$0xf]
    %v745 = vld [vmem:[%s1 + $0xb2c] sm:$0xf]
    %v746 = vld [vmem:[%s1 + $0xb30] sm:$0xf]
    %v747 = vld [vmem:[%s1 + $0xb34] sm:$0xf]
    %v748 = vld [vmem:[%s1 + $0xb38] sm:$0xf]
    %v749 = vld [vmem:[%s1 + $0xb3c] sm:$0xf]
    %v750 = vld [vmem:[%s1 + $0xb40] sm:$0xf]
    %v751 = vld [vmem:[%s1 + $0xb44] sm:$0xf]
    %v752 = vld [vmem:[%s1 + $0xb48] sm:$0xf]
    %v753 = vld [vmem:[%s1 + $0xb4c] sm:$0xf]
    %v754 = vld [vmem:[%s1 + $0xb50] sm:$0xf]
    %v755 = vld [vmem:[%s1 + $0xb54] sm:$0xf]
    %v756 = vld [vmem:[%s1 + $0xb58] sm:$0xf]
    %v757 = vld [vmem:[%s1 + $0xb5c] sm:$0xf]
    %v758 = vld [vmem:[%s1 + $0xb60] sm:$0xf]
    %v759 = vld [vmem:[%s1 + $0xb64] sm:$0xf]
    %v760 = vld [vmem:[%s1 + $0xb68] sm:$0xf]
    %v761 = vld [vmem:[%s1 + $0xb6c] sm:$0xf]
    %v762 = vld [vmem:[%s1 + $0xb70] sm:$0xf]
    %v763 = vld [vmem:[%s1 + $0xb74] sm:$0xf]
    %v764 = vld [vmem:[%s1 + $0xb78] sm:$0xf]
    %v765 = vld [vmem:[%s1 + $0xb7c] sm:$0xf]
    %v766 = vld [vmem:[%s1 + $0xb80] sm:$0xf]
    %v767 = vld [vmem:[%s1 + $0xb84] sm:$0xf]
    %v768 = vld [vmem:[%s1 + $0xb88] sm:$0xf]
    %v769 = vld [vmem:[%s1 + $0xb8c] sm:$0xf]
    %v770 = vld [vmem:[%s1 + $0xb90] sm:$0xf]
    %v771 = vld [vmem:[%s1 + $0xb94] sm:$0xf]
    %v772 = vld [vmem:[%s1 + $0xb98] sm:$0xf]
    %v773 = vld [vmem:[%s1 + $0xb9c] sm:$0xf]
    %v774 = vld [vmem:[%s1 + $0xba0] sm:$0xf]
    %v775 = vld [vmem:[%s1 + $0xba4] sm:$0xf]
    %v776 = vld [vmem:[%s1 + $0xba8] sm:$0xf]
    %v777 = vld [vmem:[%s1 + $0xbac] sm:$0xf]
    %v778 = vld [vmem:[%s1 + $0xbb0] sm:$0xf]
    %v779 = vld [vmem:[%s1 + $0xbb4] sm:$0xf]
    %v780 = vld [vmem:[%s1 + $0xbb8] sm:$0xf]
    %v781 = vld [vmem:[%s1 + $0xbbc] sm:$0xf]
    %v782 = vld [vmem:[%s1 + $0xbc0] sm:$0xf]
    %v783 = vld [vmem:[%s1 + $0xbc4] sm:$0xf]
    %v784 = vld [vmem:[%s1 + $0xbc8] sm:$0xf]
    %v785 = vld [vmem:[%s1 + $0xbcc] sm:$0xf]
    %v786 = vld [vmem:[%s1 + $0xbd0] sm:$0xf]
    %v787 = vld [vmem:[%s1 + $0xbd4] sm:$0xf]
    %v788 = vld [vmem:[%s1 + $0xbd8] sm:$0xf]
    %v789 = vld [vmem:[%s1 + $0xbdc] sm:$0xf]
    %v790 = vld [vmem:[%s1 + $0xbe0] sm:$0xf]
    %v791 = vld [vmem:[%s1 + $0xbe4] sm:$0xf]
    %v792 = vld [vmem:[%s1 + $0xbe8] sm:$0xf]
    %v793 = vld [vmem:[%s1 + $0xbec] sm:$0xf]
    %v794 = vld [vmem:[%s1 + $0xbf0] sm:$0xf]
    %v795 = vld [vmem:[%s1 + $0xbf4] sm:$0xf]
    %v796 = vld [vmem:[%s1 + $0xbf8] sm:$0xf]
    %v797 = vld [vmem:[%s1 + $0xbfc] sm:$0xf]
    %v798 = vld [vmem:[%s1 + $0xc00] sm:$0xf]
    %v799 = vld [vmem:[%s1 + $0xc04] sm:$0xf]
    %v800 = vld [vmem:[%s1 + $0xc08] sm:$0xf]
    %v801 = vld [vmem:[%s1 + $0xc0c] sm:$0xf]
    %v802 = vld [vmem:[%s1 + $0xc10] sm:$0xf]
    %v803 = vld [vmem:[%s1 + $0xc14] sm:$0xf]
    %v804 = vld [vmem:[%s1 + $0xc18] sm:$0xf]
    %v805 = vld [vmem:[%s1 + $0xc1c] sm:$0xf]
    %v806 = vld [vmem:[%s1 + $0xc20] sm:$0xf]
    %v807 = vld [vmem:[%s1 + $0xc24] sm:$0xf]
    %v808 = vld [vmem:[%s1 + $0xc28] sm:$0xf]
    %v809 = vld [vmem:[%s1 + $0xc2c] sm:$0xf]
    %v810 = vld [vmem:[%s1 + $0xc30] sm:$0xf]
    %v811 = vld [vmem:[%s1 + $0xc34] sm:$0xf]
    %v812 = vld [vmem:[%s1 + $0xc38] sm:$0xf]
    %v813 = vld [vmem:[%s1 + $0xc3c] sm:$0xf]
    %v814 = vld [vmem:[%s1 + $0xc40] sm:$0xf]
    %v815 = vld [vmem:[%s1 + $0xc44] sm:$0xf]
    %v816 = vld [vmem:[%s1 + $0xc48] sm:$0xf]
    %v817 = vld [vmem:[%s1 + $0xc4c] sm:$0xf]
    %v818 = vld [vmem:[%s1 + $0xc50] sm:$0xf]
    %v819 = vld [vmem:[%s1 + $0xc54] sm:$0xf]
    %v820 = vld [vmem:[%s1 + $0xc58] sm:$0xf]
    %v821 = vld [vmem:[%s1 + $0xc5c] sm:$0xf]
    %v822 = vld [vmem:[%s1 + $0xc60] sm:$0xf]
    %v823 = vld [vmem:[%s1 + $0xc64] sm:$0xf]
    %v824 = vld [vmem:[%s1 + $0xc68] sm:$0xf]
    %v825 = vld [vmem:[%s1 + $0xc6c] sm:$0xf]
    %v826 = vld [vmem:[%s1 + $0xc70] sm:$0xf]
    %v827 = vld [vmem:[%s1 + $0xc74] sm:$0xf]
    %v828 = vld [vmem:[%s1 + $0xc78] sm:$0xf]
    %v829 = vld [vmem:[%s1 + $0xc7c] sm:$0xf]
    %v830 = vld [vmem:[%s1 + $0xc80] sm:$0xf]
    %v831 = vld [vmem:[%s1 + $0xc84] sm:$0xf]
    %v832 = vld [vmem:[%s1 + $0xc88] sm:$0xf]
    %v833 = vld [vmem:[%s1 + $0xc8c] sm:$0xf]
    %v834 = vld [vmem:[%s1 + $0xc90] sm:$0xf]
    %v835 = vld [vmem:[%s1 + $0xc94] sm:$0xf]
    %v836 = vld [vmem:[%s1 + $0xc98] sm:$0xf]
    %v837 = vld [vmem:[%s1 + $0xc9c] sm:$0xf]
    %v838 = vld [vmem:[%s1 + $0xca0] sm:$0xf]
    %v839 = vld [vmem:[%s1 + $0xca4] sm:$0xf]
    %v840 = vld [vmem:[%s1 + $0xca8] sm:$0xf]
    %v841 = vld [vmem:[%s1 + $0xcac] sm:$0xf]
    %v842 = vld [vmem:[%s1 + $0xcb0] sm:$0xf]
    %v843 = vld [vmem:[%s1 + $0xcb4] sm:$0xf]
    %v844 = vld [vmem:[%s1 + $0xcb8] sm:$0xf]
    %v845 = vld [vmem:[%s1 + $0xcbc] sm:$0xf]
    %v846 = vld [vmem:[%s1 + $0xcc0] sm:$0xf]
    %v847 = vld [vmem:[%s1 + $0xcc4] sm:$0xf]
    %v848 = vld [vmem:[%s1 + $0xcc8] sm:$0xf]
    %v849 = vld [vmem:[%s1 + $0xccc] sm:$0xf]
    %v850 = vld [vmem:[%s1 + $0xcd0] sm:$0xf]
    %v851 = vld [vmem:[%s1 + $0xcd4] sm:$0xf]
    %v852 = vld [vmem:[%s1 + $0xcd8] sm:$0xf]
    %v853 = vld [vmem:[%s1 + $0xcdc] sm:$0xf]
    %v854 = vld [vmem:[%s1 + $0xce0] sm:$0xf]
    %v855 = vld [vmem:[%s1 + $0xce4] sm:$0xf]
    %v856 = vld [vmem:[%s1 + $0xce8] sm:$0xf]
    %v857 = vld [vmem:[%s1 + $0xcec] sm:$0xf]
    %v858 = vld [vmem:[%s1 + $0xcf0] sm:$0xf]
    %v859 = vld [vmem:[%s1 + $0xcf4] sm:$0xf]
    %v860 = vld [vmem:[%s1 + $0xcf8] sm:$0xf]
    %v861 = vld [vmem:[%s1 + $0xcfc] sm:$0xf]
    %v862 = vld [vmem:[%s1 + $0xd00] sm:$0xf]
    %v863 = vld [vmem:[%s1 + $0xd04] sm:$0xf]
    %v864 = vld [vmem:[%s1 + $0xd08] sm:$0xf]
    %v865 = vld [vmem:[%s1 + $0xd0c] sm:$0xf]
    %v866 = vld [vmem:[%s1 + $0xd10] sm:$0xf]
    %v867 = vld [vmem:[%s1 + $0xd14] sm:$0xf]
    %v868 = vld [vmem:[%s1 + $0xd18] sm:$0xf]
    %v869 = vld [vmem:[%s1 + $0xd1c] sm:$0xf]
    %v870 = vld [vmem:[%s1 + $0xd20] sm:$0xf]
    %v871 = vld [vmem:[%s1 + $0xd24] sm:$0xf]
    %v872 = vld [vmem:[%s1 + $0xd28] sm:$0xf]
    %v873 = vld [vmem:[%s1 + $0xd2c] sm:$0xf]
    %v874 = vld [vmem:[%s1 + $0xd30] sm:$0xf]
    %v875 = vld [vmem:[%s1 + $0xd34] sm:$0xf]
    %v876 = vld [vmem:[%s1 + $0xd38] sm:$0xf]
    %v877 = vld [vmem:[%s1 + $0xd3c] sm:$0xf]
    %v878 = vld [vmem:[%s1 + $0xd40] sm:$0xf]
    %v879 = vld [vmem:[%s1 + $0xd44] sm:$0xf]
    %v880 = vld [vmem:[%s1 + $0xd48] sm:$0xf]
    %v881 = vld [vmem:[%s1 + $0xd4c] sm:$0xf]
    %v882 = vld [vmem:[%s1 + $0xd50] sm:$0xf]
    %v883 = vld [vmem:[%s1 + $0xd54] sm:$0xf]
    %v884 = vld [vmem:[%s1 + $0xd58] sm:$0xf]
    %v885 = vld [vmem:[%s1 + $0xd5c] sm:$0xf]
    %v886 = vld [vmem:[%s1 + $0xd60] sm:$0xf]
    %v887 = vld [vmem:[%s1 + $0xd64] sm:$0xf]
    %v888 = vld [vmem:[%s1 + $0xd68] sm:$0xf]
    %v889 = vld [vmem:[%s1 + $0xd6c] sm:$0xf]
    %v890 = vld [vmem:[%s1 + $0xd70] sm:$0xf]
    %v891 = vld [vmem:[%s1 + $0xd74] sm:$0xf]
    %v892 = vld [vmem:[%s1 + $0xd78] sm:$0xf]
    %v893 = vld [vmem:[%s1 + $0xd7c] sm:$0xf]
    %v894 = vld [vmem:[%s1 + $0xd80] sm:$0xf]
    %v895 = vld [vmem:[%s1 + $0xd84] sm:$0xf]
    %v896 = vld [vmem:[%s1 + $0xd88] sm:$0xf]
    %v897 = vld [vmem:[%s1 + $0xd8c] sm:$0xf]
    %v898 = vld [vmem:[%s1 + $0xd90] sm:$0xf]
    %v899 = vld [vmem:[%s1 + $0xd94] sm:$0xf]
    %v900 = vld [vmem:[%s1 + $0xd98] sm:$0xf]
    %v901 = vld [vmem:[%s1 + $0xd9c] sm:$0xf]
    %v902 = vld [vmem:[%s1 + $0xda0] sm:$0xf]
    %v903 = vld [vmem:[%s1 + $0xda4] sm:$0xf]
    %v904 = vld [vmem:[%s1 + $0xda8] sm:$0xf]
    %v905 = vld [vmem:[%s1 + $0xdac] sm:$0xf]
    %v906 = vld [vmem:[%s1 + $0xdb0] sm:$0xf]
    %v907 = vld [vmem:[%s1 + $0xdb4] sm:$0xf]
    %v908 = vld [vmem:[%s1 + $0xdb8] sm:$0xf]
    %v909 = vld [vmem:[%s1 + $0xdbc] sm:$0xf]
    %v910 = vld [vmem:[%s1 + $0xdc0] sm:$0xf]
    %v911 = vld [vmem:[%s1 + $0xdc4] sm:$0xf]
    %v912 = vld [vmem:[%s1 + $0xdc8] sm:$0xf]
    %v913 = vld [vmem:[%s1 + $0xdcc] sm:$0xf]
    %v914 = vld [vmem:[%s1 + $0xdd0] sm:$0xf]
    %v915 = vld [vmem:[%s1 + $0xdd4] sm:$0xf]
    %v916 = vld [vmem:[%s1 + $0xdd8] sm:$0xf]
    %v917 = vld [vmem:[%s1 + $0xddc] sm:$0xf]
    %v918 = vld [vmem:[%s1 + $0xde0] sm:$0xf]
    %v919 = vld [vmem:[%s1 + $0xde4] sm:$0xf]
    %v920 = vld [vmem:[%s1 + $0xde8] sm:$0xf]
    %v921 = vld [vmem:[%s1 + $0xdec] sm:$0xf]
    %v922 = vld [vmem:[%s1 + $0xdf0] sm:$0xf]
    %v923 = vld [vmem:[%s1 + $0xdf4] sm:$0xf]
    %v924 = vld [vmem:[%s1 + $0xdf8] sm:$0xf]
    %v925 = vld [vmem:[%s1 + $0xdfc] sm:$0xf]
    %v926 = vld [vmem:[%s1 + $0xe00] sm:$0xf]
    %v927 = vld [vmem:[%s1 + $0xe04] sm:$0xf]
    %v928 = vld [vmem:[%s1 + $0xe08] sm:$0xf]
    %v929 = vld [vmem:[%s1 + $0xe0c] sm:$0xf]
    %v930 = vld [vmem:[%s1 + $0xe10] sm:$0xf]
    %v931 = vld [vmem:[%s1 + $0xe14] sm:$0xf]
    %v932 = vld [vmem:[%s1 + $0xe18] sm:$0xf]
    %v933 = vld [vmem:[%s1 + $0xe1c] sm:$0xf]
    %v934 = vld [vmem:[%s1 + $0xe20] sm:$0xf]
    %v935 = vld [vmem:[%s1 + $0xe24] sm:$0xf]
    %v936 = vld [vmem:[%s1 + $0xe28] sm:$0xf]
    %v937 = vld [vmem:[%s1 + $0xe2c] sm:$0xf]
    %v938 = vld [vmem:[%s1 + $0xe30] sm:$0xf]
    %v939 = vld [vmem:[%s1 + $0xe34] sm:$0xf]
    %v940 = vld [vmem:[%s1 + $0xe38] sm:$0xf]
    %v941 = vld [vmem:[%s1 + $0xe3c] sm:$0xf]
    %v942 = vld [vmem:[%s1 + $0xe40] sm:$0xf]
    %v943 = vld [vmem:[%s1 + $0xe44] sm:$0xf]
    %v944 = vld [vmem:[%s1 + $0xe48] sm:$0xf]
    %v945 = vld [vmem:[%s1 + $0xe4c] sm:$0xf]
    %v946 = vld [vmem:[%s1 + $0xe50] sm:$0xf]
    %v947 = vld [vmem:[%s1 + $0xe54] sm:$0xf]
    %v948 = vld [vmem:[%s1 + $0xe58] sm:$0xf]
    %v949 = vld [vmem:[%s1 + $0xe5c] sm:$0xf]
    %v950 = vld [vmem:[%s1 + $0xe60] sm:$0xf]
    %v951 = vld [vmem:[%s1 + $0xe64] sm:$0xf]
    %v952 = vld [vmem:[%s1 + $0xe68] sm:$0xf]
    %v953 = vld [vmem:[%s1 + $0xe6c] sm:$0xf]
    %v954 = vld [vmem:[%s1 + $0xe70] sm:$0xf]
    %v955 = vld [vmem:[%s1 + $0xe74] sm:$0xf]
    %v956 = vld [vmem:[%s1 + $0xe78] sm:$0xf]
    %v957 = vld [vmem:[%s1 + $0xe7c] sm:$0xf]
    %v958 = vld [vmem:[%s1 + $0xe80] sm:$0xf]
    %v959 = vld [vmem:[%s1 + $0xe84] sm:$0xf]
    %v960 = vld [vmem:[%s1 + $0xe88] sm:$0xf]
    %v961 = vld [vmem:[%s1 + $0xe8c] sm:$0xf]
    %v962 = vld [vmem:[%s1 + $0xe90] sm:$0xf]
    %v963 = vld [vmem:[%s1 + $0xe94] sm:$0xf]
    %v964 = vld [vmem:[%s1 + $0xe98] sm:$0xf]
    %v965 = vld [vmem:[%s1 + $0xe9c] sm:$0xf]
    %v966 = vld [vmem:[%s1 + $0xea0] sm:$0xf]
    %v967 = vld [vmem:[%s1 + $0xea4] sm:$0xf]
    %v968 = vld [vmem:[%s1 + $0xea8] sm:$0xf]
    %v969 = vld [vmem:[%s1 + $0xeac] sm:$0xf]
    %v970 = vld [vmem:[%s1 + $0xeb0] sm:$0xf]
    %v971 = vld [vmem:[%s1 + $0xeb4] sm:$0xf]
    %v972 = vld [vmem:[%s1 + $0xeb8] sm:$0xf]
    %v973 = vld [vmem:[%s1 + $0xebc] sm:$0xf]
    %v974 = vld [vmem:[%s1 + $0xec0] sm:$0xf]
    %v975 = vld [vmem:[%s1 + $0xec4] sm:$0xf]
    %v976 = vld [vmem:[%s1 + $0xec8] sm:$0xf]
    %v977 = vld [vmem:[%s1 + $0xecc] sm:$0xf]
    %v978 = vld [vmem:[%s1 + $0xed0] sm:$0xf]
    %v979 = vld [vmem:[%s1 + $0xed4] sm:$0xf]
    %v980 = vld [vmem:[%s1 + $0xed8] sm:$0xf]
    %v981 = vld [vmem:[%s1 + $0xedc] sm:$0xf]
    %v982 = vld [vmem:[%s1 + $0xee0] sm:$0xf]
    %v983 = vld [vmem:[%s1 + $0xee4] sm:$0xf]
    %v984 = vld [vmem:[%s1 + $0xee8] sm:$0xf]
    %v985 = vld [vmem:[%s1 + $0xeec] sm:$0xf]
    %v986 = vld [vmem:[%s1 + $0xef0] sm:$0xf]
    %v987 = vld [vmem:[%s1 + $0xef4] sm:$0xf]
    %v988 = vld [vmem:[%s1 + $0xef8] sm:$0xf]
    %v989 = vld [vmem:[%s1 + $0xefc] sm:$0xf]
    %v990 = vld [vmem:[%s1 + $0xf00] sm:$0xf]
    %v991 = vld [vmem:[%s1 + $0xf04] sm:$0xf]
    %v992 = vld [vmem:[%s1 + $0xf08] sm:$0xf]
    %v993 = vld [vmem:[%s1 + $0xf0c] sm:$0xf]
    %v994 = vld [vmem:[%s1 + $0xf10] sm:$0xf]
    %v995 = vld [vmem:[%s1 + $0xf14] sm:$0xf]
    %v996 = vld [vmem:[%s1 + $0xf18] sm:$0xf]
    %v997 = vld [vmem:[%s1 + $0xf1c] sm:$0xf]
    %v998 = vld [vmem:[%s1 + $0xf20] sm:$0xf]
    %v999 = vld [vmem:[%s1 + $0xf24] sm:$0xf]
    %v1000 = vld [vmem:[%s1 + $0xf28] sm:$0xf]
    %v1001 = vld [vmem:[%s1 + $0xf2c] sm:$0xf]
    %v1002 = vld [vmem:[%s1 + $0xf30] sm:$0xf]
    %v1003 = vld [vmem:[%s1 + $0xf34] sm:$0xf]
    %v1004 = vld [vmem:[%s1 + $0xf38] sm:$0xf]
    %v1005 = vld [vmem:[%s1 + $0xf3c] sm:$0xf]
    %v1006 = vld [vmem:[%s1 + $0xf40] sm:$0xf]
    %v1007 = vld [vmem:[%s1 + $0xf44] sm:$0xf]
    %v1008 = vld [vmem:[%s1 + $0xf48] sm:$0xf]
    %v1009 = vld [vmem:[%s1 + $0xf4c] sm:$0xf]
    %v1010 = vld [vmem:[%s1 + $0xf50] sm:$0xf]
    %v1011 = vld [vmem:[%s1 + $0xf54] sm:$0xf]
    %v1012 = vld [vmem:[%s1 + $0xf58] sm:$0xf]
    %v1013 = vld [vmem:[%s1 + $0xf5c] sm:$0xf]
    %v1014 = vld [vmem:[%s1 + $0xf60] sm:$0xf]
    %v1015 = vld [vmem:[%s1 + $0xf64] sm:$0xf]
    %v1016 = vld [vmem:[%s1 + $0xf68] sm:$0xf]
    %v1017 = vld [vmem:[%s1 + $0xf6c] sm:$0xf]
    %v1018 = vld [vmem:[%s1 + $0xf70] sm:$0xf]
    %v1019 = vld [vmem:[%s1 + $0xf74] sm:$0xf]
    %v1020 = vld [vmem:[%s1 + $0xf78] sm:$0xf]
    %v1021 = vld [vmem:[%s1 + $0xf7c] sm:$0xf]
    %v1022 = vld [vmem:[%s1 + $0xf80] sm:$0xf]
    %v1023 = vld [vmem:[%s1 + $0xf84] sm:$0xf]
    %v1024 = vld [vmem:[%s1 + $0xf88] sm:$0xf]
    %v1025 = vld [vmem:[%s1 + $0xf8c] sm:$0xf]
    %v1026 = vld [vmem:[%s1 + $0xf90] sm:$0xf]
    %v1027 = vld [vmem:[%s1 + $0xf94] sm:$0xf]
    %v1028 = vld [vmem:[%s1 + $0xf98] sm:$0xf]
    %v1029 = vld [vmem:[%s1 + $0xf9c] sm:$0xf]
    %v1030 = vld [vmem:[%s1 + $0xfa0] sm:$0xf]
    %v1031 = vld [vmem:[%s1 + $0xfa4] sm:$0xf]
    %v1032 = vld [vmem:[%s1 + $0xfa8] sm:$0xf]
    %v1033 = vld [vmem:[%s1 + $0xfac] sm:$0xf]
    %v1034 = vld [vmem:[%s1 + $0xfb0] sm:$0xf]
    %v1035 = vld [vmem:[%s1 + $0xfb4] sm:$0xf]
    %v1036 = vld [vmem:[%s1 + $0xfb8] sm:$0xf]
    %v1037 = vld [vmem:[%s1 + $0xfbc] sm:$0xf]
    %v1038 = vld [vmem:[%s1 + $0xfc0] sm:$0xf]
    %v1039 = vld [vmem:[%s1 + $0xfc4] sm:$0xf]
    %v1040 = vld [vmem:[%s1 + $0xfc8] sm:$0xf]
    %v1041 = vld [vmem:[%s1 + $0xfcc] sm:$0xf]
    %v1042 = vld [vmem:[%s1 + $0xfd0] sm:$0xf]
    %v1043 = vld [vmem:[%s1 + $0xfd4] sm:$0xf]
    %v1044 = vld [vmem:[%s1 + $0xfd8] sm:$0xf]
    %v1045 = vld [vmem:[%s1 + $0xfdc] sm:$0xf]
    %v1046 = vld [vmem:[%s1 + $0xfe0] sm:$0xf]
    %v1047 = vld [vmem:[%s1 + $0xfe4] sm:$0xf]
    %v1048 = vld [vmem:[%s1 + $0xfe8] sm:$0xf]
    %v1049 = vld [vmem:[%s1 + $0xfec] sm:$0xf]
    %v1050 = vld [vmem:[%s1 + $0xff0] sm:$0xf]
    %v1051 = vld [vmem:[%s1 + $0xff4] sm:$0xf]
    %v1052 = vld [vmem:[%s1 + $0xff8] sm:$0xf]
    %v1053 = vld [vmem:[%s1 + $0xffc] sm:$0xf]
    %v1054 = vld [vmem:[%s1 + $0x1000] sm:$0xf]
    %v1055 = vld [vmem:[%s1 + $0x1004] sm:$0xf]
    %v1056 = vld [vmem:[%s1 + $0x1008] sm:$0xf]
    %v1057 = vld [vmem:[%s1 + $0x100c] sm:$0xf]
    %v1058 = vld [vmem:[%s1 + $0x1010] sm:$0xf]
    %v1059 = vld [vmem:[%s1 + $0x1014] sm:$0xf]
    %v1060 = vld [vmem:[%s1 + $0x1018] sm:$0xf]
    %v1061 = vld [vmem:[%s1 + $0x101c] sm:$0xf]
    %v1062 = vld [vmem:[%s1 + $0x1020] sm:$0xf]
    %v1063 = vld [vmem:[%s1 + $0x1024] sm:$0xf]
    %v1064 = vld [vmem:[%s1 + $0x1028] sm:$0xf]
    %v1065 = vld [vmem:[%s1 + $0x102c] sm:$0xf]
    %v1066 = vld [vmem:[%s1 + $0x1030] sm:$0xf]
    %v1067 = vld [vmem:[%s1 + $0x1034] sm:$0xf]
    %v1068 = vld [vmem:[%s1 + $0x1038] sm:$0xf]
    %v1069 = vld [vmem:[%s1 + $0x103c] sm:$0xf]
    %v1070 = vld [vmem:[%s1 + $0x1040] sm:$0xf]
    %v1071 = vld [vmem:[%s1 + $0x1044] sm:$0xf]
    %v1072 = vld [vmem:[%s1 + $0x1048] sm:$0xf]
    %v1073 = vld [vmem:[%s1 + $0x104c] sm:$0xf]
    %v1074 = vld [vmem:[%s1 + $0x1050] sm:$0xf]
    %v1075 = vld [vmem:[%s1 + $0x1054] sm:$0xf]
    %v1076 = vld [vmem:[%s1 + $0x1058] sm:$0xf]
    %v1077 = vld [vmem:[%s1 + $0x105c] sm:$0xf]
    %v1078 = vld [vmem:[%s1 + $0x1060] sm:$0xf]
    %v1079 = vld [vmem:[%s1 + $0x1064] sm:$0xf]
    %v1080 = vld [vmem:[%s1 + $0x1068] sm:$0xf]
    %v1081 = vld [vmem:[%s1 + $0x106c] sm:$0xf]
    %v1082 = vld [vmem:[%s1 + $0x1070] sm:$0xf]
    %v1083 = vld [vmem:[%s1 + $0x1074] sm:$0xf]
    %v1084 = vld [vmem:[%s1 + $0x1078] sm:$0xf]
    %v1085 = vld [vmem:[%s1 + $0x107c] sm:$0xf]
    %v1086 = vld [vmem:[%s1 + $0x1080] sm:$0xf]
    %v1087 = vld [vmem:[%s1 + $0x1084] sm:$0xf]
    %v1088 = vld [vmem:[%s1 + $0x1088] sm:$0xf]
    %v1089 = vld [vmem:[%s1 + $0x108c] sm:$0xf]
    %v1090 = vld [vmem:[%s1 + $0x1090] sm:$0xf]
    %v1091 = vld [vmem:[%s1 + $0x1094] sm:$0xf]
    %v1092 = vld [vmem:[%s1 + $0x1098] sm:$0xf]
    %v1093 = vld [vmem:[%s1 + $0x109c] sm:$0xf]
    %v1094 = vld [vmem:[%s1 + $0x10a0] sm:$0xf]
    %v1095 = vld [vmem:[%s1 + $0x10a4] sm:$0xf]
    %v1096 = vld [vmem:[%s1 + $0x10a8] sm:$0xf]
    %v1097 = vld [vmem:[%s1 + $0x10ac] sm:$0xf]
    %v1098 = vld [vmem:[%s1 + $0x10b0] sm:$0xf]
    %v1099 = vld [vmem:[%s1 + $0x10b4] sm:$0xf]
    %v1100 = vld [vmem:[%s1 + $0x10b8] sm:$0xf]
    %v1101 = vld [vmem:[%s1 + $0x10bc] sm:$0xf]
    %v1102 = vld [vmem:[%s1 + $0x10c0] sm:$0xf]
    %v1103 = vld [vmem:[%s1 + $0x10c4] sm:$0xf]
    %v1104 = vld [vmem:[%s1 + $0x10c8] sm:$0xf]
    %v1105 = vld [vmem:[%s1 + $0x10cc] sm:$0xf]
    %v1106 = vld [vmem:[%s1 + $0x10d0] sm:$0xf]
    %v1107 = vld [vmem:[%s1 + $0x10d4] sm:$0xf]
    %v1108 = vld [vmem:[%s1 + $0x10d8] sm:$0xf]
    %v1109 = vld [vmem:[%s1 + $0x10dc] sm:$0xf]
    %v1110 = vld [vmem:[%s1 + $0x10e0] sm:$0xf]
    %v1111 = vld [vmem:[%s1 + $0x10e4] sm:$0xf]
    %v1112 = vld [vmem:[%s1 + $0x10e8] sm:$0xf]
    %v1113 = vld [vmem:[%s1 + $0x10ec] sm:$0xf]
    %v1114 = vld [vmem:[%s1 + $0x10f0] sm:$0xf]
    %v1115 = vld [vmem:[%s1 + $0x10f4] sm:$0xf]
    %v1116 = vld [vmem:[%s1 + $0x10f8] sm:$0xf]
    %v1117 = vld [vmem:[%s1 + $0x10fc] sm:$0xf]
    %v1118 = vld [vmem:[%s1 + $0x1100] sm:$0xf]
    %v1119 = vld [vmem:[%s1 + $0x1104] sm:$0xf]
    %v1120 = vld [vmem:[%s1 + $0x1108] sm:$0xf]
    %v1121 = vld [vmem:[%s1 + $0x110c] sm:$0xf]
    %v1122 = vld [vmem:[%s1 + $0x1110] sm:$0xf]
    %v1123 = vld [vmem:[%s1 + $0x1114] sm:$0xf]
    %v1124 = vld [vmem:[%s1 + $0x1118] sm:$0xf]
    %v1125 = vld [vmem:[%s1 + $0x111c] sm:$0xf]
    %v1126 = vld [vmem:[%s1 + $0x1120] sm:$0xf]
    %v1127 = vld [vmem:[%s1 + $0x1124] sm:$0xf]
    %v1128 = vld [vmem:[%s1 + $0x1128] sm:$0xf]
    %v1129 = vld [vmem:[%s1 + $0x112c] sm:$0xf]
    %v1130 = vld [vmem:[%s1 + $0x1130] sm:$0xf]
    %v1131 = vld [vmem:[%s1 + $0x1134] sm:$0xf]
    %v1132 = vld [vmem:[%s1 + $0x1138] sm:$0xf]
    %v1133 = vld [vmem:[%s1 + $0x113c] sm:$0xf]
    %v1134 = vld [vmem:[%s1 + $0x1140] sm:$0xf]
    %v1135 = vld [vmem:[%s1 + $0x1144] sm:$0xf]
    %v1136 = vld [vmem:[%s1 + $0x1148] sm:$0xf]
    %v1137 = vld [vmem:[%s1 + $0x114c] sm:$0xf]
    %v1138 = vld [vmem:[%s1 + $0x1150] sm:$0xf]
    %v1139 = vld [vmem:[%s1 + $0x1154] sm:$0xf]
    %v1140 = vld [vmem:[%s1 + $0x1158] sm:$0xf]
    %v1141 = vld [vmem:[%s1 + $0x115c] sm:$0xf]
    %v1142 = vld [vmem:[%s1 + $0x1160] sm:$0xf]
    %v1143 = vld [vmem:[%s1 + $0x1164] sm:$0xf]
    %v1144 = vld [vmem:[%s1 + $0x1168] sm:$0xf]
    %v1145 = vld [vmem:[%s1 + $0x116c] sm:$0xf]
    %v1146 = vld [vmem:[%s1 + $0x1170] sm:$0xf]
    %v1147 = vld [vmem:[%s1 + $0x1174] sm:$0xf]
    %v1148 = vld [vmem:[%s1 + $0x1178] sm:$0xf]
    %v1149 = vld [vmem:[%s1 + $0x117c] sm:$0xf]
    %v1150 = vld [vmem:[%s1 + $0x1180] sm:$0xf]
    %v1151 = vld [vmem:[%s1 + $0x1184] sm:$0xf]
    %v1152 = vld [vmem:[%s1 + $0x1188] sm:$0xf]
    %v1153 = vld [vmem:[%s1 + $0x118c] sm:$0xf]
    %v1154 = vld [vmem:[%s1 + $0x1190] sm:$0xf]
    %v1155 = vld [vmem:[%s1 + $0x1194] sm:$0xf]
    %v1156 = vld [vmem:[%s1 + $0x1198] sm:$0xf]
    %v1157 = vld [vmem:[%s1 + $0x119c] sm:$0xf]
    %v1158 = vld [vmem:[%s1 + $0x11a0] sm:$0xf]
    %v1159 = vld [vmem:[%s1 + $0x11a4] sm:$0xf]
    %v1160 = vld [vmem:[%s1 + $0x11a8] sm:$0xf]
    %v1161 = vld [vmem:[%s1 + $0x11ac] sm:$0xf]
    %v1162 = vld [vmem:[%s1 + $0x11b0] sm:$0xf]
    %v1163 = vld [vmem:[%s1 + $0x11b4] sm:$0xf]
    %v1164 = vld [vmem:[%s1 + $0x11b8] sm:$0xf]
    %v1165 = vld [vmem:[%s1 + $0x11bc] sm:$0xf]
    %v1166 = vld [vmem:[%s1 + $0x11c0] sm:$0xf]
    %v1167 = vld [vmem:[%s1 + $0x11c4] sm:$0xf]
    %v1168 = vld [vmem:[%s1 + $0x11c8] sm:$0xf]
    %v1169 = vld [vmem:[%s1 + $0x11cc] sm:$0xf]
    %v1170 = vld [vmem:[%s1 + $0x11d0] sm:$0xf]
    %v1171 = vld [vmem:[%s1 + $0x11d4] sm:$0xf]
    %v1172 = vld [vmem:[%s1 + $0x11d8] sm:$0xf]
    %v1173 = vld [vmem:[%s1 + $0x11dc] sm:$0xf]
    %v1174 = vld [vmem:[%s1 + $0x11e0] sm:$0xf]
    %v1175 = vld [vmem:[%s1 + $0x11e4] sm:$0xf]
    %v1176 = vld [vmem:[%s1 + $0x11e8] sm:$0xf]
    %v1177 = vld [vmem:[%s1 + $0x11ec] sm:$0xf]
    %v1178 = vld [vmem:[%s1 + $0x11f0] sm:$0xf]
    %v1179 = vld [vmem:[%s1 + $0x11f4] sm:$0xf]
    %v1180 = vld [vmem:[%s1 + $0x11f8] sm:$0xf]
    %v1181 = vld [vmem:[%s1 + $0x11fc] sm:$0xf]
    %v1182 = vld [vmem:[%s2] sm:$0x1]
    %v1184 = vperm.slane %v1182, 0
    %1187 = vst [vmem:[#allocation1] ss:$9 sm:$0xff] %v21
    %v1188 = vld [vmem:[#allocation1] sm:$0xff]
    %v1189 = vld [vmem:[#allocation1 + $0x9] sm:$0xff]
    %v1190 = vld [vmem:[#allocation1 + $0x12] sm:$0xff]
    %v1191 = vld [vmem:[#allocation1 + $0x1b] sm:$0xff]
    %v1192 = vld [vmem:[#allocation1 + $0x24] sm:$0xff]
    %v1193 = vld [vmem:[#allocation1 + $0x2d] sm:$0xff]
    %v1194 = vld [vmem:[#allocation1 + $0x36] sm:$0xff]
    %v1195 = vld [vmem:[#allocation1 + $0x3f] sm:$0xff]
    %1197 = vst [vmem:[#allocation1] ss:$9 sm:$0xff] %v22
    %v1198 = vld [vmem:[#allocation1] sm:$0xff]
    %v1199 = vld [vmem:[#allocation1 + $0x9] sm:$0xff]
    %v1200 = vld [vmem:[#allocation1 + $0x12] sm:$0xff]
    %v1201 = vld [vmem:[#allocation1 + $0x1b] sm:$0xff]
    %v1202 = vld [vmem:[#allocation1 + $0x24] sm:$0xff]
    %v1203 = vld [vmem:[#allocation1 + $0x2d] sm:$0xff]
    %v1204 = vld [vmem:[#allocation1 + $0x36] sm:$0xff]
    %v1205 = vld [vmem:[#allocation1 + $0x3f] sm:$0xff]
    %1207 = vst [vmem:[#allocation1] ss:$9 sm:$0xff] %v23
    %v1208 = vld [vmem:[#allocation1] sm:$0xff]
    %v1209 = vld [vmem:[#allocation1 + $0x9] sm:$0xff]
    %v1210 = vld [vmem:[#allocation1 + $0x12] sm:$0xff]
    %v1211 = vld [vmem:[#allocation1 + $0x1b] sm:$0xff]
    %v1212 = vld [vmem:[#allocation1 + $0x24] sm:$0xff]
    %v1213 = vld [vmem:[#allocation1 + $0x2d] sm:$0xff]
    %v1214 = vld [vmem:[#allocation1 + $0x36] sm:$0xff]
    %v1215 = vld [vmem:[#allocation1 + $0x3f] sm:$0xff]
    %1217 = vst [vmem:[#allocation1] ss:$9 sm:$0xff] %v24
    %v1218 = vld [vmem:[#allocation1] sm:$0xff]
    %v1219 = vld [vmem:[#allocation1 + $0x9] sm:$0xff]
    %v1220 = vld [vmem:[#allocation1 + $0x12] sm:$0xff]
    %v1221 = vld [vmem:[#allocation1 + $0x1b] sm:$0xff]
    %v1222 = vld [vmem:[#allocation1 + $0x24] sm:$0xff]
    %v1223 = vld [vmem:[#allocation1 + $0x2d] sm:$0xff]
    %v1224 = vld [vmem:[#allocation1 + $0x36] sm:$0xff]
    %v1225 = vld [vmem:[#allocation1 + $0x3f] sm:$0xff]
    %1227 = vst [vmem:[#allocation1] ss:$9 sm:$0xff] %v25
    %v1228 = vld [vmem:[#allocation1] sm:$0xff]
    %v1229 = vld [vmem:[#allocation1 + $0x9] sm:$0xff]
    %v1230 = vld [vmem:[#allocation1 + $0x12] sm:$0xff]
    %v1231 = vld [vmem:[#allocation1 + $0x1b] sm:$0xff]
    %v1232 = vld [vmem:[#allocation1 + $0x24] sm:$0xff]
    %v1233 = vld [vmem:[#allocation1 + $0x2d] sm:$0xff]
    %v1234 = vld [vmem:[#allocation1 + $0x36] sm:$0xff]
    %v1235 = vld [vmem:[#allocation1 + $0x3f] sm:$0xff]
    %1237 = vst [vmem:[#allocation1] ss:$9 sm:$0xff] %v26
    %v1238 = vld [vmem:[#allocation1] sm:$0xff]
    %v1239 = vld [vmem:[#allocation1 + $0x9] sm:$0xff]
    %v1240 = vld [vmem:[#allocation1 + $0x12] sm:$0xff]
    %v1241 = vld [vmem:[#allocation1 + $0x1b] sm:$0xff]
    %v1242 = vld [vmem:[#allocation1 + $0x24] sm:$0xff]
    %v1243 = vld [vmem:[#allocation1 + $0x2d] sm:$0xff]
    %v1244 = vld [vmem:[#allocation1 + $0x36] sm:$0xff]
    %v1245 = vld [vmem:[#allocation1 + $0x3f] sm:$0xff]
    %1247 = vst [vmem:[#allocation1] ss:$9 sm:$0xff] %v27
    %v1248 = vld [vmem:[#allocation1] sm:$0xff]
    %v1249 = vld [vmem:[#allocation1 + $0x9] sm:$0xff]
    %v1250 = vld [vmem:[#allocation1 + $0x12] sm:$0xff]
    %v1251 = vld [vmem:[#allocation1 + $0x1b] sm:$0xff]
    %v1252 = vld [vmem:[#allocation1 + $0x24] sm:$0xff]
    %v1253 = vld [vmem:[#allocation1 + $0x2d] sm:$0xff]
    %v1254 = vld [vmem:[#allocation1 + $0x36] sm:$0xff]
    %v1255 = vld [vmem:[#allocation1 + $0x3f] sm:$0xff]
    %1257 = vst [vmem:[#allocation1] ss:$9 sm:$0xff] %v28
    %v1258 = vld [vmem:[#allocation1] sm:$0xff]
    %v1259 = vld [vmem:[#allocation1 + $0x9] sm:$0xff]
    %v1260 = vld [vmem:[#allocation1 + $0x12] sm:$0xff]
    %v1261 = vld [vmem:[#allocation1 + $0x1b] sm:$0xff]
    %v1262 = vld [vmem:[#allocation1 + $0x24] sm:$0xff]
    %v1263 = vld [vmem:[#allocation1 + $0x2d] sm:$0xff]
    %v1264 = vld [vmem:[#allocation1 + $0x36] sm:$0xff]
    %v1265 = vld [vmem:[#allocation1 + $0x3f] sm:$0xff]
    %1267 = vst [vmem:[#allocation1] ss:$9 sm:$0xff] %v29
    %v1268 = vld [vmem:[#allocation1] sm:$0xff]
    %v1269 = vld [vmem:[#allocation1 + $0x9] sm:$0xff]
    %v1270 = vld [vmem:[#allocation1 + $0x12] sm:$0xff]
    %v1271 = vld [vmem:[#allocation1 + $0x1b] sm:$0xff]
    %v1272 = vld [vmem:[#allocation1 + $0x24] sm:$0xff]
    %v1273 = vld [vmem:[#allocation1 + $0x2d] sm:$0xff]
    %v1274 = vld [vmem:[#allocation1 + $0x36] sm:$0xff]
    %v1275 = vld [vmem:[#allocation1 + $0x3f] sm:$0xff]
    %v2500 = vunpack.c.l.b16 %v30
    %v2501 = vunpack.c.l.b16 %v31
    %v2502 = vunpack.c.l.b16 %v32
    %v2503 = vunpack.c.l.b16 %v33
    %v2504 = vunpack.c.l.b16 %v34
    %v2505 = vunpack.c.l.b16 %v35
    %v2506 = vunpack.c.l.b16 %v36
    %v2507 = vunpack.c.l.b16 %v37
    %v2508 = vunpack.c.l.b16 %v38
    %v2509 = vunpack.c.l.b16 %v39
    %v2510 = vunpack.c.l.b16 %v40
    %v2511 = vunpack.c.l.b16 %v41
    %v2512 = vunpack.c.l.b16 %v42
    %v2513 = vunpack.c.l.b16 %v43
    %v2514 = vunpack.c.l.b16 %v44
    %v2515 = vunpack.c.l.b16 %v45
    %v2516 = vunpack.c.l.b16 %v46
    %v2517 = vunpack.c.l.b16 %v47
    %v2518 = vunpack.c.l.b16 %v48
    %v2519 = vunpack.c.l.b16 %v49
    %v2520 = vunpack.c.l.b16 %v50
    %v2521 = vunpack.c.l.b16 %v51
    %v2522 = vunpack.c.l.b16 %v52
    %v2523 = vunpack.c.l.b16 %v53
    %v2524 = vunpack.c.l.b16 %v54
    %v2525 = vunpack.c.l.b16 %v55
    %v2526 = vunpack.c.l.b16 %v56
    %v2527 = vunpack.c.l.b16 %v57
    %v2528 = vunpack.c.l.b16 %v58
    %v2529 = vunpack.c.l.b16 %v59
    %v2530 = vunpack.c.l.b16 %v60
    %v2531 = vunpack.c.l.b16 %v61
    %v2532 = vunpack.c.l.b16 %v62
    %v2533 = vunpack.c.l.b16 %v63
    %v2534 = vunpack.c.l.b16 %v64
    %v2535 = vunpack.c.l.b16 %v65
    %v2536 = vunpack.c.l.b16 %v66
    %v2537 = vunpack.c.l.b16 %v67
    %v2538 = vunpack.c.l.b16 %v68
    %v2539 = vunpack.c.l.b16 %v69
    %v2540 = vunpack.c.l.b16 %v70
    %v2541 = vunpack.c.l.b16 %v71
    %v2542 = vunpack.c.l.b16 %v72
    %v2543 = vunpack.c.l.b16 %v73
    %v2544 = vunpack.c.l.b16 %v74
    %v2545 = vunpack.c.l.b16 %v75
    %v2546 = vunpack.c.l.b16 %v76
    %v2547 = vunpack.c.l.b16 %v77
    %v2548 = vunpack.c.l.b16 %v78
    %v2549 = vunpack.c.l.b16 %v79
    %v2550 = vunpack.c.l.b16 %v80
    %v2551 = vunpack.c.l.b16 %v81
    %v2552 = vunpack.c.l.b16 %v82
    %v2553 = vunpack.c.l.b16 %v83
    %v2554 = vunpack.c.l.b16 %v84
    %v2555 = vunpack.c.l.b16 %v85
    %v2556 = vunpack.c.l.b16 %v86
    %v2557 = vunpack.c.l.b16 %v87
    %v2558 = vunpack.c.l.b16 %v88
    %v2559 = vunpack.c.l.b16 %v89
    %v2560 = vunpack.c.l.b16 %v90
    %v2561 = vunpack.c.l.b16 %v91
    %v2562 = vunpack.c.l.b16 %v92
    %v2563 = vunpack.c.l.b16 %v93
    %v2564 = vunpack.c.l.b16 %v94
    %v2565 = vunpack.c.l.b16 %v95
    %v2566 = vunpack.c.l.b16 %v96
    %v2567 = vunpack.c.l.b16 %v97
    %v2568 = vunpack.c.l.b16 %v98
    %v2569 = vunpack.c.l.b16 %v99
    %v2570 = vunpack.c.l.b16 %v100
    %v2571 = vunpack.c.l.b16 %v101
    %v2572 = vunpack.c.l.b16 %v102
    %v2573 = vunpack.c.l.b16 %v103
    %v2574 = vunpack.c.l.b16 %v104
    %v2575 = vunpack.c.l.b16 %v105
    %v2576 = vunpack.c.l.b16 %v106
    %v2577 = vunpack.c.l.b16 %v107
    %v2578 = vunpack.c.l.b16 %v108
    %v2579 = vunpack.c.l.b16 %v109
    %v2580 = vunpack.c.l.b16 %v110
    %v2581 = vunpack.c.l.b16 %v111
    %v2582 = vunpack.c.l.b16 %v112
    %v2583 = vunpack.c.l.b16 %v113
    %v2584 = vunpack.c.l.b16 %v114
    %v2585 = vunpack.c.l.b16 %v115
    %v2586 = vunpack.c.l.b16 %v116
    %v2587 = vunpack.c.l.b16 %v117
    %v2588 = vunpack.c.l.b16 %v118
    %v2589 = vunpack.c.l.b16 %v119
    %v2590 = vunpack.c.l.b16 %v120
    %v2591 = vunpack.c.l.b16 %v121
    %v2592 = vunpack.c.l.b16 %v122
    %v2593 = vunpack.c.l.b16 %v123
    %v2594 = vunpack.c.l.b16 %v124
    %v2595 = vunpack.c.l.b16 %v125
    %v2596 = vunpack.c.l.b16 %v126
    %v2597 = vunpack.c.l.b16 %v127
    %v2598 = vunpack.c.l.b16 %v128
    %v2599 = vunpack.c.l.b16 %v129
    %v2600 = vunpack.c.l.b16 %v130
    %v2601 = vunpack.c.l.b16 %v131
    %v2602 = vunpack.c.l.b16 %v132
    %v2603 = vunpack.c.l.b16 %v133
    %v2604 = vunpack.c.l.b16 %v134
    %v2605 = vunpack.c.l.b16 %v135
    %v2606 = vunpack.c.l.b16 %v136
    %v2607 = vunpack.c.l.b16 %v137
    %v2608 = vunpack.c.l.b16 %v138
    %v2609 = vunpack.c.l.b16 %v139
    %v2610 = vunpack.c.l.b16 %v140
    %v2611 = vunpack.c.l.b16 %v141
    %v2612 = vunpack.c.l.b16 %v142
    %v2613 = vunpack.c.l.b16 %v143
    %v2614 = vunpack.c.l.b16 %v144
    %v2615 = vunpack.c.l.b16 %v145
    %v2616 = vunpack.c.l.b16 %v146
    %v2617 = vunpack.c.l.b16 %v147
    %v2618 = vunpack.c.l.b16 %v148
    %v2619 = vunpack.c.l.b16 %v149
    %v2620 = vunpack.c.l.b16 %v150
    %v2621 = vunpack.c.l.b16 %v151
    %v2622 = vunpack.c.l.b16 %v152
    %v2623 = vunpack.c.l.b16 %v153
    %v2624 = vunpack.c.l.b16 %v154
    %v2625 = vunpack.c.l.b16 %v155
    %v2626 = vunpack.c.l.b16 %v156
    %v2627 = vunpack.c.l.b16 %v157
    %v2628 = vunpack.c.l.b16 %v158
    %v2629 = vunpack.c.l.b16 %v159
    %v2630 = vunpack.c.l.b16 %v160
    %v2631 = vunpack.c.l.b16 %v161
    %v2632 = vunpack.c.l.b16 %v162
    %v2633 = vunpack.c.l.b16 %v163
    %v2634 = vunpack.c.l.b16 %v164
    %v2635 = vunpack.c.l.b16 %v165
    %v2636 = vunpack.c.l.b16 %v166
    %v2637 = vunpack.c.l.b16 %v167
    %v2638 = vunpack.c.l.b16 %v168
    %v2639 = vunpack.c.l.b16 %v169
    %v2640 = vunpack.c.l.b16 %v170
    %v2641 = vunpack.c.l.b16 %v171
    %v2642 = vunpack.c.l.b16 %v172
    %v2643 = vunpack.c.l.b16 %v173
    %v2644 = vunpack.c.l.b16 %v174
    %v2645 = vunpack.c.l.b16 %v175
    %v2646 = vunpack.c.l.b16 %v176
    %v2647 = vunpack.c.l.b16 %v177
    %v2648 = vunpack.c.l.b16 %v178
    %v2649 = vunpack.c.l.b16 %v179
    %v2650 = vunpack.c.l.b16 %v180
    %v2651 = vunpack.c.l.b16 %v181
    %v2652 = vunpack.c.l.b16 %v182
    %v2653 = vunpack.c.l.b16 %v183
    %v2654 = vunpack.c.l.b16 %v184
    %v2655 = vunpack.c.l.b16 %v185
    %v2656 = vunpack.c.l.b16 %v186
    %v2657 = vunpack.c.l.b16 %v187
    %v2658 = vunpack.c.l.b16 %v188
    %v2659 = vunpack.c.l.b16 %v189
    %v2660 = vunpack.c.l.b16 %v190
    %v2661 = vunpack.c.l.b16 %v191
    %v2662 = vunpack.c.l.b16 %v192
    %v2663 = vunpack.c.l.b16 %v193
    %v2664 = vunpack.c.l.b16 %v194
    %v2665 = vunpack.c.l.b16 %v195
    %v2666 = vunpack.c.l.b16 %v196
    %v2667 = vunpack.c.l.b16 %v197
    %v2668 = vunpack.c.l.b16 %v198
    %v2669 = vunpack.c.l.b16 %v199
    %v2670 = vunpack.c.l.b16 %v200
    %v2671 = vunpack.c.l.b16 %v201
    %v2672 = vunpack.c.l.b16 %v202
    %v2673 = vunpack.c.l.b16 %v203
    %v2674 = vunpack.c.l.b16 %v204
    %v2675 = vunpack.c.l.b16 %v205
    %v2676 = vunpack.c.l.b16 %v206
    %v2677 = vunpack.c.l.b16 %v207
    %v2678 = vunpack.c.l.b16 %v208
    %v2679 = vunpack.c.l.b16 %v209
    %v2680 = vunpack.c.l.b16 %v210
    %v2681 = vunpack.c.l.b16 %v211
    %v2682 = vunpack.c.l.b16 %v212
    %v2683 = vunpack.c.l.b16 %v213
    %v2684 = vunpack.c.l.b16 %v214
    %v2685 = vunpack.c.l.b16 %v215
    %v2686 = vunpack.c.l.b16 %v216
    %v2687 = vunpack.c.l.b16 %v217
    %v2688 = vunpack.c.l.b16 %v218
    %v2689 = vunpack.c.l.b16 %v219
    %v2690 = vunpack.c.l.b16 %v220
    %v2691 = vunpack.c.l.b16 %v221
    %v2692 = vunpack.c.l.b16 %v222
    %v2693 = vunpack.c.l.b16 %v223
    %v2694 = vunpack.c.l.b16 %v224
    %v2695 = vunpack.c.l.b16 %v225
    %v2696 = vunpack.c.l.b16 %v226
    %v2697 = vunpack.c.l.b16 %v227
    %v2698 = vunpack.c.l.b16 %v228
    %v2699 = vunpack.c.l.b16 %v229
    %v2700 = vunpack.c.l.b16 %v230
    %v2701 = vunpack.c.l.b16 %v231
    %v2702 = vunpack.c.l.b16 %v232
    %v2703 = vunpack.c.l.b16 %v233
    %v2704 = vunpack.c.l.b16 %v234
    %v2705 = vunpack.c.l.b16 %v235
    %v2706 = vunpack.c.l.b16 %v236
    %v2707 = vunpack.c.l.b16 %v237
    %v2708 = vunpack.c.l.b16 %v238
    %v2709 = vunpack.c.l.b16 %v239
    %v2710 = vunpack.c.l.b16 %v240
    %v2711 = vunpack.c.l.b16 %v241
    %v2712 = vunpack.c.l.b16 %v242
    %v2713 = vunpack.c.l.b16 %v243
    %v2714 = vunpack.c.l.b16 %v244
    %v2715 = vunpack.c.l.b16 %v245
    %v2716 = vunpack.c.l.b16 %v246
    %v2717 = vunpack.c.l.b16 %v247
    %v2718 = vunpack.c.l.b16 %v248
    %v2719 = vunpack.c.l.b16 %v249
    %v2720 = vunpack.c.l.b16 %v250
    %v2721 = vunpack.c.l.b16 %v251
    %v2722 = vunpack.c.l.b16 %v252
    %v2723 = vunpack.c.l.b16 %v253
    %v2724 = vunpack.c.l.b16 %v254
    %v2725 = vunpack.c.l.b16 %v255
    %v2726 = vunpack.c.l.b16 %v256
    %v2727 = vunpack.c.l.b16 %v257
    %v2728 = vunpack.c.l.b16 %v258
    %v2729 = vunpack.c.l.b16 %v259
    %v2730 = vunpack.c.l.b16 %v260
    %v2731 = vunpack.c.l.b16 %v261
    %v2732 = vunpack.c.l.b16 %v262
    %v2733 = vunpack.c.l.b16 %v263
    %v2734 = vunpack.c.l.b16 %v264
    %v2735 = vunpack.c.l.b16 %v265
    %v2736 = vunpack.c.l.b16 %v266
    %v2737 = vunpack.c.l.b16 %v267
    %v2738 = vunpack.c.l.b16 %v268
    %v2739 = vunpack.c.l.b16 %v269
    %v2740 = vunpack.c.l.b16 %v270
    %v2741 = vunpack.c.l.b16 %v271
    %v2742 = vunpack.c.l.b16 %v272
    %v2743 = vunpack.c.l.b16 %v273
    %v2744 = vunpack.c.l.b16 %v274
    %v2745 = vunpack.c.l.b16 %v275
    %v2746 = vunpack.c.l.b16 %v276
    %v2747 = vunpack.c.l.b16 %v277
    %v2748 = vunpack.c.l.b16 %v278
    %v2749 = vunpack.c.l.b16 %v279
    %v2750 = vunpack.c.l.b16 %v280
    %v2751 = vunpack.c.l.b16 %v281
    %v2752 = vunpack.c.l.b16 %v282
    %v2753 = vunpack.c.l.b16 %v283
    %v2754 = vunpack.c.l.b16 %v284
    %v2755 = vunpack.c.l.b16 %v285
    %v2756 = vunpack.c.l.b16 %v286
    %v2757 = vunpack.c.l.b16 %v287
    %v2758 = vunpack.c.l.b16 %v288
    %v2759 = vunpack.c.l.b16 %v289
    %v2760 = vunpack.c.l.b16 %v290
    %v2761 = vunpack.c.l.b16 %v291
    %v2762 = vunpack.c.l.b16 %v292
    %v2763 = vunpack.c.l.b16 %v293
    %v2764 = vunpack.c.l.b16 %v294
    %v2765 = vunpack.c.l.b16 %v295
    %v2766 = vunpack.c.l.b16 %v296
    %v2767 = vunpack.c.l.b16 %v297
    %v2768 = vunpack.c.l.b16 %v298
    %v2769 = vunpack.c.l.b16 %v299
    %v2770 = vunpack.c.l.b16 %v300
    %v2771 = vunpack.c.l.b16 %v301
    %v2772 = vunpack.c.l.b16 %v302
    %v2773 = vunpack.c.l.b16 %v303
    %v2774 = vunpack.c.l.b16 %v304
    %v2775 = vunpack.c.l.b16 %v305
    %v2776 = vunpack.c.l.b16 %v306
    %v2777 = vunpack.c.l.b16 %v307
    %v2778 = vunpack.c.l.b16 %v308
    %v2779 = vunpack.c.l.b16 %v309
    %v2780 = vunpack.c.l.b16 %v310
    %v2781 = vunpack.c.l.b16 %v311
    %v2782 = vunpack.c.l.b16 %v312
    %v2783 = vunpack.c.l.b16 %v313
    %v2784 = vunpack.c.l.b16 %v314
    %v2785 = vunpack.c.l.b16 %v315
    %v2786 = vunpack.c.l.b16 %v316
    %v2787 = vunpack.c.l.b16 %v317
    %v2788 = vunpack.c.l.b16 %v318
    %v2789 = vunpack.c.l.b16 %v319
    %v2790 = vunpack.c.l.b16 %v320
    %v2791 = vunpack.c.l.b16 %v321
    %v2792 = vunpack.c.l.b16 %v322
    %v2793 = vunpack.c.l.b16 %v323
    %v2794 = vunpack.c.l.b16 %v324
    %v2795 = vunpack.c.l.b16 %v325
    %v2796 = vunpack.c.l.b16 %v326
    %v2797 = vunpack.c.l.b16 %v327
    %v2798 = vunpack.c.l.b16 %v328
    %v2799 = vunpack.c.l.b16 %v329
    %v2800 = vunpack.c.l.b16 %v330
    %v2801 = vunpack.c.l.b16 %v331
    %v2802 = vunpack.c.l.b16 %v332
    %v2803 = vunpack.c.l.b16 %v333
    %v2804 = vunpack.c.l.b16 %v334
    %v2805 = vunpack.c.l.b16 %v335
    %v2806 = vunpack.c.l.b16 %v336
    %v2807 = vunpack.c.l.b16 %v337
    %v2808 = vunpack.c.l.b16 %v338
    %v2809 = vunpack.c.l.b16 %v339
    %v2810 = vunpack.c.l.b16 %v340
    %v2811 = vunpack.c.l.b16 %v341
    %v2812 = vunpack.c.l.b16 %v342
    %v2813 = vunpack.c.l.b16 %v343
    %v2814 = vunpack.c.l.b16 %v344
    %v2815 = vunpack.c.l.b16 %v345
    %v2816 = vunpack.c.l.b16 %v346
    %v2817 = vunpack.c.l.b16 %v347
    %v2818 = vunpack.c.l.b16 %v348
    %v2819 = vunpack.c.l.b16 %v349
    %v2820 = vunpack.c.l.b16 %v350
    %v2821 = vunpack.c.l.b16 %v351
    %v2822 = vunpack.c.l.b16 %v352
    %v2823 = vunpack.c.l.b16 %v353
    %v2824 = vunpack.c.l.b16 %v354
    %v2825 = vunpack.c.l.b16 %v355
    %v2826 = vunpack.c.l.b16 %v356
    %v2827 = vunpack.c.l.b16 %v357
    %v2828 = vunpack.c.l.b16 %v358
    %v2829 = vunpack.c.l.b16 %v359
    %v2830 = vunpack.c.l.b16 %v360
    %v2831 = vunpack.c.l.b16 %v361
    %v2832 = vunpack.c.l.b16 %v362
    %v2833 = vunpack.c.l.b16 %v363
    %v2834 = vunpack.c.l.b16 %v364
    %v2835 = vunpack.c.l.b16 %v365
    %v2836 = vunpack.c.l.b16 %v366
    %v2837 = vunpack.c.l.b16 %v367
    %v2838 = vunpack.c.l.b16 %v368
    %v2839 = vunpack.c.l.b16 %v369
    %v2840 = vunpack.c.l.b16 %v370
    %v2841 = vunpack.c.l.b16 %v371
    %v2842 = vunpack.c.l.b16 %v372
    %v2843 = vunpack.c.l.b16 %v373
    %v2844 = vunpack.c.l.b16 %v374
    %v2845 = vunpack.c.l.b16 %v375
    %v2846 = vunpack.c.l.b16 %v376
    %v2847 = vunpack.c.l.b16 %v377
    %v2848 = vunpack.c.l.b16 %v378
    %v2849 = vunpack.c.l.b16 %v379
    %v2850 = vunpack.c.l.b16 %v380
    %v2851 = vunpack.c.l.b16 %v381
    %v2852 = vunpack.c.l.b16 %v382
    %v2853 = vunpack.c.l.b16 %v383
    %v2854 = vunpack.c.l.b16 %v384
    %v2855 = vunpack.c.l.b16 %v385
    %v2856 = vunpack.c.l.b16 %v386
    %v2857 = vunpack.c.l.b16 %v387
    %v2858 = vunpack.c.l.b16 %v388
    %v2859 = vunpack.c.l.b16 %v389
    %v2860 = vunpack.c.l.b16 %v390
    %v2861 = vunpack.c.l.b16 %v391
    %v2862 = vunpack.c.l.b16 %v392
    %v2863 = vunpack.c.l.b16 %v393
    %v2864 = vunpack.c.l.b16 %v394
    %v2865 = vunpack.c.l.b16 %v395
    %v2866 = vunpack.c.l.b16 %v396
    %v2867 = vunpack.c.l.b16 %v397
    %v2868 = vunpack.c.l.b16 %v398
    %v2869 = vunpack.c.l.b16 %v399
    %v2870 = vunpack.c.l.b16 %v400
    %v2871 = vunpack.c.l.b16 %v401
    %v2872 = vunpack.c.l.b16 %v402
    %v2873 = vunpack.c.l.b16 %v403
    %v2874 = vunpack.c.l.b16 %v404
    %v2875 = vunpack.c.l.b16 %v405
    %v2876 = vunpack.c.l.b16 %v406
    %v2877 = vunpack.c.l.b16 %v407
    %v2878 = vunpack.c.l.b16 %v408
    %v2879 = vunpack.c.l.b16 %v409
    %v2880 = vunpack.c.l.b16 %v410
    %v2881 = vunpack.c.l.b16 %v411
    %v2882 = vunpack.c.l.b16 %v412
    %v2883 = vunpack.c.l.b16 %v413
    %v2884 = vunpack.c.l.b16 %v414
    %v2885 = vunpack.c.l.b16 %v415
    %v2886 = vunpack.c.l.b16 %v416
    %v2887 = vunpack.c.l.b16 %v417
    %v2888 = vunpack.c.l.b16 %v418
    %v2889 = vunpack.c.l.b16 %v419
    %v2890 = vunpack.c.l.b16 %v420
    %v2891 = vunpack.c.l.b16 %v421
    %v2892 = vunpack.c.l.b16 %v422
    %v2893 = vunpack.c.l.b16 %v423
    %v2894 = vunpack.c.l.b16 %v424
    %v2895 = vunpack.c.l.b16 %v425
    %v2896 = vunpack.c.l.b16 %v426
    %v2897 = vunpack.c.l.b16 %v427
    %v2898 = vunpack.c.l.b16 %v428
    %v2899 = vunpack.c.l.b16 %v429
    %v2900 = vunpack.c.l.b16 %v430
    %v2901 = vunpack.c.l.b16 %v431
    %v2902 = vunpack.c.l.b16 %v432
    %v2903 = vunpack.c.l.b16 %v433
    %v2904 = vunpack.c.l.b16 %v434
    %v2905 = vunpack.c.l.b16 %v435
    %v2906 = vunpack.c.l.b16 %v436
    %v2907 = vunpack.c.l.b16 %v437
    %v2908 = vunpack.c.l.b16 %v438
    %v2909 = vunpack.c.l.b16 %v439
    %v2910 = vunpack.c.l.b16 %v440
    %v2911 = vunpack.c.l.b16 %v441
    %v2912 = vunpack.c.l.b16 %v442
    %v2913 = vunpack.c.l.b16 %v443
    %v2914 = vunpack.c.l.b16 %v444
    %v2915 = vunpack.c.l.b16 %v445
    %v2916 = vunpack.c.l.b16 %v446
    %v2917 = vunpack.c.l.b16 %v447
    %v2918 = vunpack.c.l.b16 %v448
    %v2919 = vunpack.c.l.b16 %v449
    %v2920 = vunpack.c.l.b16 %v450
    %v2921 = vunpack.c.l.b16 %v451
    %v2922 = vunpack.c.l.b16 %v452
    %v2923 = vunpack.c.l.b16 %v453
    %v2924 = vunpack.c.l.b16 %v454
    %v2925 = vunpack.c.l.b16 %v455
    %v2926 = vunpack.c.l.b16 %v456
    %v2927 = vunpack.c.l.b16 %v457
    %v2928 = vunpack.c.l.b16 %v458
    %v2929 = vunpack.c.l.b16 %v459
    %v2930 = vunpack.c.l.b16 %v460
    %v2931 = vunpack.c.l.b16 %v461
    %v2932 = vunpack.c.l.b16 %v462
    %v2933 = vunpack.c.l.b16 %v463
    %v2934 = vunpack.c.l.b16 %v464
    %v2935 = vunpack.c.l.b16 %v465
    %v2936 = vunpack.c.l.b16 %v466
    %v2937 = vunpack.c.l.b16 %v467
    %v2938 = vunpack.c.l.b16 %v468
    %v2939 = vunpack.c.l.b16 %v469
    %v2940 = vunpack.c.l.b16 %v470
    %v2941 = vunpack.c.l.b16 %v471
    %v2942 = vunpack.c.l.b16 %v472
    %v2943 = vunpack.c.l.b16 %v473
    %v2944 = vunpack.c.l.b16 %v474
    %v2945 = vunpack.c.l.b16 %v475
    %v2946 = vunpack.c.l.b16 %v476
    %v2947 = vunpack.c.l.b16 %v477
    %v2948 = vunpack.c.l.b16 %v478
    %v2949 = vunpack.c.l.b16 %v479
    %v2950 = vunpack.c.l.b16 %v480
    %v2951 = vunpack.c.l.b16 %v481
    %v2952 = vunpack.c.l.b16 %v482
    %v2953 = vunpack.c.l.b16 %v483
    %v2954 = vunpack.c.l.b16 %v484
    %v2955 = vunpack.c.l.b16 %v485
    %v2956 = vunpack.c.l.b16 %v486
    %v2957 = vunpack.c.l.b16 %v487
    %v2958 = vunpack.c.l.b16 %v488
    %v2959 = vunpack.c.l.b16 %v489
    %v2960 = vunpack.c.l.b16 %v490
    %v2961 = vunpack.c.l.b16 %v491
    %v2962 = vunpack.c.l.b16 %v492
    %v2963 = vunpack.c.l.b16 %v493
    %v2964 = vunpack.c.l.b16 %v494
    %v2965 = vunpack.c.l.b16 %v495
    %v2966 = vunpack.c.l.b16 %v496
    %v2967 = vunpack.c.l.b16 %v497
    %v2968 = vunpack.c.l.b16 %v498
    %v2969 = vunpack.c.l.b16 %v499
    %v2970 = vunpack.c.l.b16 %v500
    %v2971 = vunpack.c.l.b16 %v501
    %v2972 = vunpack.c.l.b16 %v502
    %v2973 = vunpack.c.l.b16 %v503
    %v2974 = vunpack.c.l.b16 %v504
    %v2975 = vunpack.c.l.b16 %v505
    %v2976 = vunpack.c.l.b16 %v506
    %v2977 = vunpack.c.l.b16 %v507
    %v2978 = vunpack.c.l.b16 %v508
    %v2979 = vunpack.c.l.b16 %v509
    %v2980 = vunpack.c.l.b16 %v510
    %v2981 = vunpack.c.l.b16 %v511
    %v2982 = vunpack.c.l.b16 %v512
    %v2983 = vunpack.c.l.b16 %v513
    %v2984 = vunpack.c.l.b16 %v514
    %v2985 = vunpack.c.l.b16 %v515
    %v2986 = vunpack.c.l.b16 %v516
    %v2987 = vunpack.c.l.b16 %v517
    %v2988 = vunpack.c.l.b16 %v518
    %v2989 = vunpack.c.l.b16 %v519
    %v2990 = vunpack.c.l.b16 %v520
    %v2991 = vunpack.c.l.b16 %v521
    %v2992 = vunpack.c.l.b16 %v522
    %v2993 = vunpack.c.l.b16 %v523
    %v2994 = vunpack.c.l.b16 %v524
    %v2995 = vunpack.c.l.b16 %v525
    %v2996 = vunpack.c.l.b16 %v526
    %v2997 = vunpack.c.l.b16 %v527
    %v2998 = vunpack.c.l.b16 %v528
    %v2999 = vunpack.c.l.b16 %v529
    %v3000 = vunpack.c.l.b16 %v530
    %v3001 = vunpack.c.l.b16 %v531
    %v3002 = vunpack.c.l.b16 %v532
    %v3003 = vunpack.c.l.b16 %v533
    %v3004 = vunpack.c.l.b16 %v534
    %v3005 = vunpack.c.l.b16 %v535
    %v3006 = vunpack.c.l.b16 %v536
    %v3007 = vunpack.c.l.b16 %v537
    %v3008 = vunpack.c.l.b16 %v538
    %v3009 = vunpack.c.l.b16 %v539
    %v3010 = vunpack.c.l.b16 %v540
    %v3011 = vunpack.c.l.b16 %v541
    %v3012 = vunpack.c.l.b16 %v542
    %v3013 = vunpack.c.l.b16 %v543
    %v3014 = vunpack.c.l.b16 %v544
    %v3015 = vunpack.c.l.b16 %v545
    %v3016 = vunpack.c.l.b16 %v546
    %v3017 = vunpack.c.l.b16 %v547
    %v3018 = vunpack.c.l.b16 %v548
    %v3019 = vunpack.c.l.b16 %v549
    %v3020 = vunpack.c.l.b16 %v550
    %v3021 = vunpack.c.l.b16 %v551
    %v3022 = vunpack.c.l.b16 %v552
    %v3023 = vunpack.c.l.b16 %v553
    %v3024 = vunpack.c.l.b16 %v554
    %v3025 = vunpack.c.l.b16 %v555
    %v3026 = vunpack.c.l.b16 %v556
    %v3027 = vunpack.c.l.b16 %v557
    %v3028 = vunpack.c.l.b16 %v558
    %v3029 = vunpack.c.l.b16 %v559
    %v3030 = vunpack.c.l.b16 %v560
    %v3031 = vunpack.c.l.b16 %v561
    %v3032 = vunpack.c.l.b16 %v562
    %v3033 = vunpack.c.l.b16 %v563
    %v3034 = vunpack.c.l.b16 %v564
    %v3035 = vunpack.c.l.b16 %v565
    %v3036 = vunpack.c.l.b16 %v566
    %v3037 = vunpack.c.l.b16 %v567
    %v3038 = vunpack.c.l.b16 %v568
    %v3039 = vunpack.c.l.b16 %v569
    %v3040 = vunpack.c.l.b16 %v570
    %v3041 = vunpack.c.l.b16 %v571
    %v3042 = vunpack.c.l.b16 %v572
    %v3043 = vunpack.c.l.b16 %v573
    %v3044 = vunpack.c.l.b16 %v574
    %v3045 = vunpack.c.l.b16 %v575
    %v3046 = vunpack.c.l.b16 %v576
    %v3047 = vunpack.c.l.b16 %v577
    %v3048 = vunpack.c.l.b16 %v578
    %v3049 = vunpack.c.l.b16 %v579
    %v3050 = vunpack.c.l.b16 %v580
    %v3051 = vunpack.c.l.b16 %v581
    %v3052 = vunpack.c.l.b16 %v582
    %v3053 = vunpack.c.l.b16 %v583
    %v3054 = vunpack.c.l.b16 %v584
    %v3055 = vunpack.c.l.b16 %v585
    %v3056 = vunpack.c.l.b16 %v586
    %v3057 = vunpack.c.l.b16 %v587
    %v3058 = vunpack.c.l.b16 %v588
    %v3059 = vunpack.c.l.b16 %v589
    %v3060 = vunpack.c.l.b16 %v590
    %v3061 = vunpack.c.l.b16 %v591
    %v3062 = vunpack.c.l.b16 %v592
    %v3063 = vunpack.c.l.b16 %v593
    %v3064 = vunpack.c.l.b16 %v594
    %v3065 = vunpack.c.l.b16 %v595
    %v3066 = vunpack.c.l.b16 %v596
    %v3067 = vunpack.c.l.b16 %v597
    %v3068 = vunpack.c.l.b16 %v598
    %v3069 = vunpack.c.l.b16 %v599
    %v3070 = vunpack.c.l.b16 %v600
    %v3071 = vunpack.c.l.b16 %v601
    %v3072 = vunpack.c.l.b16 %v602
    %v3073 = vunpack.c.l.b16 %v603
    %v3074 = vunpack.c.l.b16 %v604
    %v3075 = vunpack.c.l.b16 %v605
    %v3076 = vunpack.c.l.b16 %v606
    %v3077 = vunpack.c.l.b16 %v607
    %v3078 = vunpack.c.l.b16 %v608
    %v3079 = vunpack.c.l.b16 %v609
    %v3080 = vunpack.c.l.b16 %v610
    %v3081 = vunpack.c.l.b16 %v611
    %v3082 = vunpack.c.l.b16 %v612
    %v3083 = vunpack.c.l.b16 %v613
    %v3084 = vunpack.c.l.b16 %v614
    %v3085 = vunpack.c.l.b16 %v615
    %v3086 = vunpack.c.l.b16 %v616
    %v3087 = vunpack.c.l.b16 %v617
    %v3088 = vunpack.c.l.b16 %v618
    %v3089 = vunpack.c.l.b16 %v619
    %v3090 = vunpack.c.l.b16 %v620
    %v3091 = vunpack.c.l.b16 %v621
    %v3092 = vunpack.c.l.b16 %v622
    %v3093 = vunpack.c.l.b16 %v623
    %v3094 = vunpack.c.l.b16 %v624
    %v3095 = vunpack.c.l.b16 %v625
    %v3096 = vunpack.c.l.b16 %v626
    %v3097 = vunpack.c.l.b16 %v627
    %v3098 = vunpack.c.l.b16 %v628
    %v3099 = vunpack.c.l.b16 %v629
    %v3100 = vunpack.c.l.b16 %v630
    %v3101 = vunpack.c.l.b16 %v631
    %v3102 = vunpack.c.l.b16 %v632
    %v3103 = vunpack.c.l.b16 %v633
    %v3104 = vunpack.c.l.b16 %v634
    %v3105 = vunpack.c.l.b16 %v635
    %v3106 = vunpack.c.l.b16 %v636
    %v3107 = vunpack.c.l.b16 %v637
    %v3108 = vunpack.c.l.b16 %v638
    %v3109 = vunpack.c.l.b16 %v639
    %v3110 = vunpack.c.l.b16 %v640
    %v3111 = vunpack.c.l.b16 %v641
    %v3112 = vunpack.c.l.b16 %v642
    %v3113 = vunpack.c.l.b16 %v643
    %v3114 = vunpack.c.l.b16 %v644
    %v3115 = vunpack.c.l.b16 %v645
    %v3116 = vunpack.c.l.b16 %v646
    %v3117 = vunpack.c.l.b16 %v647
    %v3118 = vunpack.c.l.b16 %v648
    %v3119 = vunpack.c.l.b16 %v649
    %v3120 = vunpack.c.l.b16 %v650
    %v3121 = vunpack.c.l.b16 %v651
    %v3122 = vunpack.c.l.b16 %v652
    %v3123 = vunpack.c.l.b16 %v653
    %v3124 = vunpack.c.l.b16 %v654
    %v3125 = vunpack.c.l.b16 %v655
    %v3126 = vunpack.c.l.b16 %v656
    %v3127 = vunpack.c.l.b16 %v657
    %v3128 = vunpack.c.l.b16 %v658
    %v3129 = vunpack.c.l.b16 %v659
    %v3130 = vunpack.c.l.b16 %v660
    %v3131 = vunpack.c.l.b16 %v661
    %v3132 = vunpack.c.l.b16 %v662
    %v3133 = vunpack.c.l.b16 %v663
    %v3134 = vunpack.c.l.b16 %v664
    %v3135 = vunpack.c.l.b16 %v665
    %v3136 = vunpack.c.l.b16 %v666
    %v3137 = vunpack.c.l.b16 %v667
    %v3138 = vunpack.c.l.b16 %v668
    %v3139 = vunpack.c.l.b16 %v669
    %v3140 = vunpack.c.l.b16 %v670
    %v3141 = vunpack.c.l.b16 %v671
    %v3142 = vunpack.c.l.b16 %v672
    %v3143 = vunpack.c.l.b16 %v673
    %v3144 = vunpack.c.l.b16 %v674
    %v3145 = vunpack.c.l.b16 %v675
    %v3146 = vunpack.c.l.b16 %v676
    %v3147 = vunpack.c.l.b16 %v677
    %v3148 = vunpack.c.l.b16 %v678
    %v3149 = vunpack.c.l.b16 %v679
    %v3150 = vunpack.c.l.b16 %v680
    %v3151 = vunpack.c.l.b16 %v681
    %v3152 = vunpack.c.l.b16 %v682
    %v3153 = vunpack.c.l.b16 %v683
    %v3154 = vunpack.c.l.b16 %v684
    %v3155 = vunpack.c.l.b16 %v685
    %v3156 = vunpack.c.l.b16 %v686
    %v3157 = vunpack.c.l.b16 %v687
    %v3158 = vunpack.c.l.b16 %v688
    %v3159 = vunpack.c.l.b16 %v689
    %v3160 = vunpack.c.l.b16 %v690
    %v3161 = vunpack.c.l.b16 %v691
    %v3162 = vunpack.c.l.b16 %v692
    %v3163 = vunpack.c.l.b16 %v693
    %v3164 = vunpack.c.l.b16 %v694
    %v3165 = vunpack.c.l.b16 %v695
    %v3166 = vunpack.c.l.b16 %v696
    %v3167 = vunpack.c.l.b16 %v697
    %v3168 = vunpack.c.l.b16 %v698
    %v3169 = vunpack.c.l.b16 %v699
    %v3170 = vunpack.c.l.b16 %v700
    %v3171 = vunpack.c.l.b16 %v701
    %v3172 = vunpack.c.l.b16 %v702
    %v3173 = vunpack.c.l.b16 %v703
    %v3174 = vunpack.c.l.b16 %v704
    %v3175 = vunpack.c.l.b16 %v705
    %v3176 = vunpack.c.l.b16 %v706
    %v3177 = vunpack.c.l.b16 %v707
    %v3178 = vunpack.c.l.b16 %v708
    %v3179 = vunpack.c.l.b16 %v709
    %v3180 = vunpack.c.l.b16 %v710
    %v3181 = vunpack.c.l.b16 %v711
    %v3182 = vunpack.c.l.b16 %v712
    %v3183 = vunpack.c.l.b16 %v713
    %v3184 = vunpack.c.l.b16 %v714
    %v3185 = vunpack.c.l.b16 %v715
    %v3186 = vunpack.c.l.b16 %v716
    %v3187 = vunpack.c.l.b16 %v717
    %v3188 = vunpack.c.l.b16 %v718
    %v3189 = vunpack.c.l.b16 %v719
    %v3190 = vunpack.c.l.b16 %v720
    %v3191 = vunpack.c.l.b16 %v721
    %v3192 = vunpack.c.l.b16 %v722
    %v3193 = vunpack.c.l.b16 %v723
    %v3194 = vunpack.c.l.b16 %v724
    %v3195 = vunpack.c.l.b16 %v725
    %v3196 = vunpack.c.l.b16 %v726
    %v3197 = vunpack.c.l.b16 %v727
    %v3198 = vunpack.c.l.b16 %v728
    %v3199 = vunpack.c.l.b16 %v729
    %v3200 = vunpack.c.l.b16 %v730
    %v3201 = vunpack.c.l.b16 %v731
    %v3202 = vunpack.c.l.b16 %v732
    %v3203 = vunpack.c.l.b16 %v733
    %v3204 = vunpack.c.l.b16 %v734
    %v3205 = vunpack.c.l.b16 %v735
    %v3206 = vunpack.c.l.b16 %v736
    %v3207 = vunpack.c.l.b16 %v737
    %v3208 = vunpack.c.l.b16 %v738
    %v3209 = vunpack.c.l.b16 %v739
    %v3210 = vunpack.c.l.b16 %v740
    %v3211 = vunpack.c.l.b16 %v741
    %v3212 = vunpack.c.l.b16 %v742
    %v3213 = vunpack.c.l.b16 %v743
    %v3214 = vunpack.c.l.b16 %v744
    %v3215 = vunpack.c.l.b16 %v745
    %v3216 = vunpack.c.l.b16 %v746
    %v3217 = vunpack.c.l.b16 %v747
    %v3218 = vunpack.c.l.b16 %v748
    %v3219 = vunpack.c.l.b16 %v749
    %v3220 = vunpack.c.l.b16 %v750
    %v3221 = vunpack.c.l.b16 %v751
    %v3222 = vunpack.c.l.b16 %v752
    %v3223 = vunpack.c.l.b16 %v753
    %v3224 = vunpack.c.l.b16 %v754
    %v3225 = vunpack.c.l.b16 %v755
    %v3226 = vunpack.c.l.b16 %v756
    %v3227 = vunpack.c.l.b16 %v757
    %v3228 = vunpack.c.l.b16 %v758
    %v3229 = vunpack.c.l.b16 %v759
    %v3230 = vunpack.c.l.b16 %v760
    %v3231 = vunpack.c.l.b16 %v761
    %v3232 = vunpack.c.l.b16 %v762
    %v3233 = vunpack.c.l.b16 %v763
    %v3234 = vunpack.c.l.b16 %v764
    %v3235 = vunpack.c.l.b16 %v765
    %v3236 = vunpack.c.l.b16 %v766
    %v3237 = vunpack.c.l.b16 %v767
    %v3238 = vunpack.c.l.b16 %v768
    %v3239 = vunpack.c.l.b16 %v769
    %v3240 = vunpack.c.l.b16 %v770
    %v3241 = vunpack.c.l.b16 %v771
    %v3242 = vunpack.c.l.b16 %v772
    %v3243 = vunpack.c.l.b16 %v773
    %v3244 = vunpack.c.l.b16 %v774
    %v3245 = vunpack.c.l.b16 %v775
    %v3246 = vunpack.c.l.b16 %v776
    %v3247 = vunpack.c.l.b16 %v777
    %v3248 = vunpack.c.l.b16 %v778
    %v3249 = vunpack.c.l.b16 %v779
    %v3250 = vunpack.c.l.b16 %v780
    %v3251 = vunpack.c.l.b16 %v781
    %v3252 = vunpack.c.l.b16 %v782
    %v3253 = vunpack.c.l.b16 %v783
    %v3254 = vunpack.c.l.b16 %v784
    %v3255 = vunpack.c.l.b16 %v785
    %v3256 = vunpack.c.l.b16 %v786
    %v3257 = vunpack.c.l.b16 %v787
    %v3258 = vunpack.c.l.b16 %v788
    %v3259 = vunpack.c.l.b16 %v789
    %v3260 = vunpack.c.l.b16 %v790
    %v3261 = vunpack.c.l.b16 %v791
    %v3262 = vunpack.c.l.b16 %v792
    %v3263 = vunpack.c.l.b16 %v793
    %v3264 = vunpack.c.l.b16 %v794
    %v3265 = vunpack.c.l.b16 %v795
    %v3266 = vunpack.c.l.b16 %v796
    %v3267 = vunpack.c.l.b16 %v797
    %v3268 = vunpack.c.l.b16 %v798
    %v3269 = vunpack.c.l.b16 %v799
    %v3270 = vunpack.c.l.b16 %v800
    %v3271 = vunpack.c.l.b16 %v801
    %v3272 = vunpack.c.l.b16 %v802
    %v3273 = vunpack.c.l.b16 %v803
    %v3274 = vunpack.c.l.b16 %v804
    %v3275 = vunpack.c.l.b16 %v805
    %v3276 = vunpack.c.l.b16 %v806
    %v3277 = vunpack.c.l.b16 %v807
    %v3278 = vunpack.c.l.b16 %v808
    %v3279 = vunpack.c.l.b16 %v809
    %v3280 = vunpack.c.l.b16 %v810
    %v3281 = vunpack.c.l.b16 %v811
    %v3282 = vunpack.c.l.b16 %v812
    %v3283 = vunpack.c.l.b16 %v813
    %v3284 = vunpack.c.l.b16 %v814
    %v3285 = vunpack.c.l.b16 %v815
    %v3286 = vunpack.c.l.b16 %v816
    %v3287 = vunpack.c.l.b16 %v817
    %v3288 = vunpack.c.l.b16 %v818
    %v3289 = vunpack.c.l.b16 %v819
    %v3290 = vunpack.c.l.b16 %v820
    %v3291 = vunpack.c.l.b16 %v821
    %v3292 = vunpack.c.l.b16 %v822
    %v3293 = vunpack.c.l.b16 %v823
    %v3294 = vunpack.c.l.b16 %v824
    %v3295 = vunpack.c.l.b16 %v825
    %v3296 = vunpack.c.l.b16 %v826
    %v3297 = vunpack.c.l.b16 %v827
    %v3298 = vunpack.c.l.b16 %v828
    %v3299 = vunpack.c.l.b16 %v829
    %v3300 = vunpack.c.l.b16 %v830
    %v3301 = vunpack.c.l.b16 %v831
    %v3302 = vunpack.c.l.b16 %v832
    %v3303 = vunpack.c.l.b16 %v833
    %v3304 = vunpack.c.l.b16 %v834
    %v3305 = vunpack.c.l.b16 %v835
    %v3306 = vunpack.c.l.b16 %v836
    %v3307 = vunpack.c.l.b16 %v837
    %v3308 = vunpack.c.l.b16 %v838
    %v3309 = vunpack.c.l.b16 %v839
    %v3310 = vunpack.c.l.b16 %v840
    %v3311 = vunpack.c.l.b16 %v841
    %v3312 = vunpack.c.l.b16 %v842
    %v3313 = vunpack.c.l.b16 %v843
    %v3314 = vunpack.c.l.b16 %v844
    %v3315 = vunpack.c.l.b16 %v845
    %v3316 = vunpack.c.l.b16 %v846
    %v3317 = vunpack.c.l.b16 %v847
    %v3318 = vunpack.c.l.b16 %v848
    %v3319 = vunpack.c.l.b16 %v849
    %v3320 = vunpack.c.l.b16 %v850
    %v3321 = vunpack.c.l.b16 %v851
    %v3322 = vunpack.c.l.b16 %v852
    %v3323 = vunpack.c.l.b16 %v853
    %v3324 = vunpack.c.l.b16 %v854
    %v3325 = vunpack.c.l.b16 %v855
    %v3326 = vunpack.c.l.b16 %v856
    %v3327 = vunpack.c.l.b16 %v857
    %v3328 = vunpack.c.l.b16 %v858
    %v3329 = vunpack.c.l.b16 %v859
    %v3330 = vunpack.c.l.b16 %v860
    %v3331 = vunpack.c.l.b16 %v861
    %v3332 = vunpack.c.l.b16 %v862
    %v3333 = vunpack.c.l.b16 %v863
    %v3334 = vunpack.c.l.b16 %v864
    %v3335 = vunpack.c.l.b16 %v865
    %v3336 = vunpack.c.l.b16 %v866
    %v3337 = vunpack.c.l.b16 %v867
    %v3338 = vunpack.c.l.b16 %v868
    %v3339 = vunpack.c.l.b16 %v869
    %v3340 = vunpack.c.l.b16 %v870
    %v3341 = vunpack.c.l.b16 %v871
    %v3342 = vunpack.c.l.b16 %v872
    %v3343 = vunpack.c.l.b16 %v873
    %v3344 = vunpack.c.l.b16 %v874
    %v3345 = vunpack.c.l.b16 %v875
    %v3346 = vunpack.c.l.b16 %v876
    %v3347 = vunpack.c.l.b16 %v877
    %v3348 = vunpack.c.l.b16 %v878
    %v3349 = vunpack.c.l.b16 %v879
    %v3350 = vunpack.c.l.b16 %v880
    %v3351 = vunpack.c.l.b16 %v881
    %v3352 = vunpack.c.l.b16 %v882
    %v3353 = vunpack.c.l.b16 %v883
    %v3354 = vunpack.c.l.b16 %v884
    %v3355 = vunpack.c.l.b16 %v885
    %v3356 = vunpack.c.l.b16 %v886
    %v3357 = vunpack.c.l.b16 %v887
    %v3358 = vunpack.c.l.b16 %v888
    %v3359 = vunpack.c.l.b16 %v889
    %v3360 = vunpack.c.l.b16 %v890
    %v3361 = vunpack.c.l.b16 %v891
    %v3362 = vunpack.c.l.b16 %v892
    %v3363 = vunpack.c.l.b16 %v893
    %v3364 = vunpack.c.l.b16 %v894
    %v3365 = vunpack.c.l.b16 %v895
    %v3366 = vunpack.c.l.b16 %v896
    %v3367 = vunpack.c.l.b16 %v897
    %v3368 = vunpack.c.l.b16 %v898
    %v3369 = vunpack.c.l.b16 %v899
    %v3370 = vunpack.c.l.b16 %v900
    %v3371 = vunpack.c.l.b16 %v901
    %v3372 = vunpack.c.l.b16 %v902
    %v3373 = vunpack.c.l.b16 %v903
    %v3374 = vunpack.c.l.b16 %v904
    %v3375 = vunpack.c.l.b16 %v905
    %v3376 = vunpack.c.l.b16 %v906
    %v3377 = vunpack.c.l.b16 %v907
    %v3378 = vunpack.c.l.b16 %v908
    %v3379 = vunpack.c.l.b16 %v909
    %v3380 = vunpack.c.l.b16 %v910
    %v3381 = vunpack.c.l.b16 %v911
    %v3382 = vunpack.c.l.b16 %v912
    %v3383 = vunpack.c.l.b16 %v913
    %v3384 = vunpack.c.l.b16 %v914
    %v3385 = vunpack.c.l.b16 %v915
    %v3386 = vunpack.c.l.b16 %v916
    %v3387 = vunpack.c.l.b16 %v917
    %v3388 = vunpack.c.l.b16 %v918
    %v3389 = vunpack.c.l.b16 %v919
    %v3390 = vunpack.c.l.b16 %v920
    %v3391 = vunpack.c.l.b16 %v921
    %v3392 = vunpack.c.l.b16 %v922
    %v3393 = vunpack.c.l.b16 %v923
    %v3394 = vunpack.c.l.b16 %v924
    %v3395 = vunpack.c.l.b16 %v925
    %v3396 = vunpack.c.l.b16 %v926
    %v3397 = vunpack.c.l.b16 %v927
    %v3398 = vunpack.c.l.b16 %v928
    %v3399 = vunpack.c.l.b16 %v929
    %v3400 = vunpack.c.l.b16 %v930
    %v3401 = vunpack.c.l.b16 %v931
    %v3402 = vunpack.c.l.b16 %v932
    %v3403 = vunpack.c.l.b16 %v933
    %v3404 = vunpack.c.l.b16 %v934
    %v3405 = vunpack.c.l.b16 %v935
    %v3406 = vunpack.c.l.b16 %v936
    %v3407 = vunpack.c.l.b16 %v937
    %v3408 = vunpack.c.l.b16 %v938
    %v3409 = vunpack.c.l.b16 %v939
    %v3410 = vunpack.c.l.b16 %v940
    %v3411 = vunpack.c.l.b16 %v941
    %v3412 = vunpack.c.l.b16 %v942
    %v3413 = vunpack.c.l.b16 %v943
    %v3414 = vunpack.c.l.b16 %v944
    %v3415 = vunpack.c.l.b16 %v945
    %v3416 = vunpack.c.l.b16 %v946
    %v3417 = vunpack.c.l.b16 %v947
    %v3418 = vunpack.c.l.b16 %v948
    %v3419 = vunpack.c.l.b16 %v949
    %v3420 = vunpack.c.l.b16 %v950
    %v3421 = vunpack.c.l.b16 %v951
    %v3422 = vunpack.c.l.b16 %v952
    %v3423 = vunpack.c.l.b16 %v953
    %v3424 = vunpack.c.l.b16 %v954
    %v3425 = vunpack.c.l.b16 %v955
    %v3426 = vunpack.c.l.b16 %v956
    %v3427 = vunpack.c.l.b16 %v957
    %v3428 = vunpack.c.l.b16 %v958
    %v3429 = vunpack.c.l.b16 %v959
    %v3430 = vunpack.c.l.b16 %v960
    %v3431 = vunpack.c.l.b16 %v961
    %v3432 = vunpack.c.l.b16 %v962
    %v3433 = vunpack.c.l.b16 %v963
    %v3434 = vunpack.c.l.b16 %v964
    %v3435 = vunpack.c.l.b16 %v965
    %v3436 = vunpack.c.l.b16 %v966
    %v3437 = vunpack.c.l.b16 %v967
    %v3438 = vunpack.c.l.b16 %v968
    %v3439 = vunpack.c.l.b16 %v969
    %v3440 = vunpack.c.l.b16 %v970
    %v3441 = vunpack.c.l.b16 %v971
    %v3442 = vunpack.c.l.b16 %v972
    %v3443 = vunpack.c.l.b16 %v973
    %v3444 = vunpack.c.l.b16 %v974
    %v3445 = vunpack.c.l.b16 %v975
    %v3446 = vunpack.c.l.b16 %v976
    %v3447 = vunpack.c.l.b16 %v977
    %v3448 = vunpack.c.l.b16 %v978
    %v3449 = vunpack.c.l.b16 %v979
    %v3450 = vunpack.c.l.b16 %v980
    %v3451 = vunpack.c.l.b16 %v981
    %v3452 = vunpack.c.l.b16 %v982
    %v3453 = vunpack.c.l.b16 %v983
    %v3454 = vunpack.c.l.b16 %v984
    %v3455 = vunpack.c.l.b16 %v985
    %v3456 = vunpack.c.l.b16 %v986
    %v3457 = vunpack.c.l.b16 %v987
    %v3458 = vunpack.c.l.b16 %v988
    %v3459 = vunpack.c.l.b16 %v989
    %v3460 = vunpack.c.l.b16 %v990
    %v3461 = vunpack.c.l.b16 %v991
    %v3462 = vunpack.c.l.b16 %v992
    %v3463 = vunpack.c.l.b16 %v993
    %v3464 = vunpack.c.l.b16 %v994
    %v3465 = vunpack.c.l.b16 %v995
    %v3466 = vunpack.c.l.b16 %v996
    %v3467 = vunpack.c.l.b16 %v997
    %v3468 = vunpack.c.l.b16 %v998
    %v3469 = vunpack.c.l.b16 %v999
    %v3470 = vunpack.c.l.b16 %v1000
    %v3471 = vunpack.c.l.b16 %v1001
    %v3472 = vunpack.c.l.b16 %v1002
    %v3473 = vunpack.c.l.b16 %v1003
    %v3474 = vunpack.c.l.b16 %v1004
    %v3475 = vunpack.c.l.b16 %v1005
    %v3476 = vunpack.c.l.b16 %v1006
    %v3477 = vunpack.c.l.b16 %v1007
    %v3478 = vunpack.c.l.b16 %v1008
    %v3479 = vunpack.c.l.b16 %v1009
    %v3480 = vunpack.c.l.b16 %v1010
    %v3481 = vunpack.c.l.b16 %v1011
    %v3482 = vunpack.c.l.b16 %v1012
    %v3483 = vunpack.c.l.b16 %v1013
    %v3484 = vunpack.c.l.b16 %v1014
    %v3485 = vunpack.c.l.b16 %v1015
    %v3486 = vunpack.c.l.b16 %v1016
    %v3487 = vunpack.c.l.b16 %v1017
    %v3488 = vunpack.c.l.b16 %v1018
    %v3489 = vunpack.c.l.b16 %v1019
    %v3490 = vunpack.c.l.b16 %v1020
    %v3491 = vunpack.c.l.b16 %v1021
    %v3492 = vunpack.c.l.b16 %v1022
    %v3493 = vunpack.c.l.b16 %v1023
    %v3494 = vunpack.c.l.b16 %v1024
    %v3495 = vunpack.c.l.b16 %v1025
    %v3496 = vunpack.c.l.b16 %v1026
    %v3497 = vunpack.c.l.b16 %v1027
    %v3498 = vunpack.c.l.b16 %v1028
    %v3499 = vunpack.c.l.b16 %v1029
    %v3500 = vunpack.c.l.b16 %v1030
    %v3501 = vunpack.c.l.b16 %v1031
    %v3502 = vunpack.c.l.b16 %v1032
    %v3503 = vunpack.c.l.b16 %v1033
    %v3504 = vunpack.c.l.b16 %v1034
    %v3505 = vunpack.c.l.b16 %v1035
    %v3506 = vunpack.c.l.b16 %v1036
    %v3507 = vunpack.c.l.b16 %v1037
    %v3508 = vunpack.c.l.b16 %v1038
    %v3509 = vunpack.c.l.b16 %v1039
    %v3510 = vunpack.c.l.b16 %v1040
    %v3511 = vunpack.c.l.b16 %v1041
    %v3512 = vunpack.c.l.b16 %v1042
    %v3513 = vunpack.c.l.b16 %v1043
    %v3514 = vunpack.c.l.b16 %v1044
    %v3515 = vunpack.c.l.b16 %v1045
    %v3516 = vunpack.c.l.b16 %v1046
    %v3517 = vunpack.c.l.b16 %v1047
    %v3518 = vunpack.c.l.b16 %v1048
    %v3519 = vunpack.c.l.b16 %v1049
    %v3520 = vunpack.c.l.b16 %v1050
    %v3521 = vunpack.c.l.b16 %v1051
    %v3522 = vunpack.c.l.b16 %v1052
    %v3523 = vunpack.c.l.b16 %v1053
    %v3524 = vunpack.c.l.b16 %v1054
    %v3525 = vunpack.c.l.b16 %v1055
    %v3526 = vunpack.c.l.b16 %v1056
    %v3527 = vunpack.c.l.b16 %v1057
    %v3528 = vunpack.c.l.b16 %v1058
    %v3529 = vunpack.c.l.b16 %v1059
    %v3530 = vunpack.c.l.b16 %v1060
    %v3531 = vunpack.c.l.b16 %v1061
    %v3532 = vunpack.c.l.b16 %v1062
    %v3533 = vunpack.c.l.b16 %v1063
    %v3534 = vunpack.c.l.b16 %v1064
    %v3535 = vunpack.c.l.b16 %v1065
    %v3536 = vunpack.c.l.b16 %v1066
    %v3537 = vunpack.c.l.b16 %v1067
    %v3538 = vunpack.c.l.b16 %v1068
    %v3539 = vunpack.c.l.b16 %v1069
    %v3540 = vunpack.c.l.b16 %v1070
    %v3541 = vunpack.c.l.b16 %v1071
    %v3542 = vunpack.c.l.b16 %v1072
    %v3543 = vunpack.c.l.b16 %v1073
    %v3544 = vunpack.c.l.b16 %v1074
    %v3545 = vunpack.c.l.b16 %v1075
    %v3546 = vunpack.c.l.b16 %v1076
    %v3547 = vunpack.c.l.b16 %v1077
    %v3548 = vunpack.c.l.b16 %v1078
    %v3549 = vunpack.c.l.b16 %v1079
    %v3550 = vunpack.c.l.b16 %v1080
    %v3551 = vunpack.c.l.b16 %v1081
    %v3552 = vunpack.c.l.b16 %v1082
    %v3553 = vunpack.c.l.b16 %v1083
    %v3554 = vunpack.c.l.b16 %v1084
    %v3555 = vunpack.c.l.b16 %v1085
    %v3556 = vunpack.c.l.b16 %v1086
    %v3557 = vunpack.c.l.b16 %v1087
    %v3558 = vunpack.c.l.b16 %v1088
    %v3559 = vunpack.c.l.b16 %v1089
    %v3560 = vunpack.c.l.b16 %v1090
    %v3561 = vunpack.c.l.b16 %v1091
    %v3562 = vunpack.c.l.b16 %v1092
    %v3563 = vunpack.c.l.b16 %v1093
    %v3564 = vunpack.c.l.b16 %v1094
    %v3565 = vunpack.c.l.b16 %v1095
    %v3566 = vunpack.c.l.b16 %v1096
    %v3567 = vunpack.c.l.b16 %v1097
    %v3568 = vunpack.c.l.b16 %v1098
    %v3569 = vunpack.c.l.b16 %v1099
    %v3570 = vunpack.c.l.b16 %v1100
    %v3571 = vunpack.c.l.b16 %v1101
    %v3572 = vunpack.c.l.b16 %v1102
    %v3573 = vunpack.c.l.b16 %v1103
    %v3574 = vunpack.c.l.b16 %v1104
    %v3575 = vunpack.c.l.b16 %v1105
    %v3576 = vunpack.c.l.b16 %v1106
    %v3577 = vunpack.c.l.b16 %v1107
    %v3578 = vunpack.c.l.b16 %v1108
    %v3579 = vunpack.c.l.b16 %v1109
    %v3580 = vunpack.c.l.b16 %v1110
    %v3581 = vunpack.c.l.b16 %v1111
    %v3582 = vunpack.c.l.b16 %v1112
    %v3583 = vunpack.c.l.b16 %v1113
    %v3584 = vunpack.c.l.b16 %v1114
    %v3585 = vunpack.c.l.b16 %v1115
    %v3586 = vunpack.c.l.b16 %v1116
    %v3587 = vunpack.c.l.b16 %v1117
    %v3588 = vunpack.c.l.b16 %v1118
    %v3589 = vunpack.c.l.b16 %v1119
    %v3590 = vunpack.c.l.b16 %v1120
    %v3591 = vunpack.c.l.b16 %v1121
    %v3592 = vunpack.c.l.b16 %v1122
    %v3593 = vunpack.c.l.b16 %v1123
    %v3594 = vunpack.c.l.b16 %v1124
    %v3595 = vunpack.c.l.b16 %v1125
    %v3596 = vunpack.c.l.b16 %v1126
    %v3597 = vunpack.c.l.b16 %v1127
    %v3598 = vunpack.c.l.b16 %v1128
    %v3599 = vunpack.c.l.b16 %v1129
    %v3600 = vunpack.c.l.b16 %v1130
    %v3601 = vunpack.c.l.b16 %v1131
    %v3602 = vunpack.c.l.b16 %v1132
    %v3603 = vunpack.c.l.b16 %v1133
    %v3604 = vunpack.c.l.b16 %v1134
    %v3605 = vunpack.c.l.b16 %v1135
    %v3606 = vunpack.c.l.b16 %v1136
    %v3607 = vunpack.c.l.b16 %v1137
    %v3608 = vunpack.c.l.b16 %v1138
    %v3609 = vunpack.c.l.b16 %v1139
    %v3610 = vunpack.c.l.b16 %v1140
    %v3611 = vunpack.c.l.b16 %v1141
    %v3612 = vunpack.c.l.b16 %v1142
    %v3613 = vunpack.c.l.b16 %v1143
    %v3614 = vunpack.c.l.b16 %v1144
    %v3615 = vunpack.c.l.b16 %v1145
    %v3616 = vunpack.c.l.b16 %v1146
    %v3617 = vunpack.c.l.b16 %v1147
    %v3618 = vunpack.c.l.b16 %v1148
    %v3619 = vunpack.c.l.b16 %v1149
    %v3620 = vunpack.c.l.b16 %v1150
    %v3621 = vunpack.c.l.b16 %v1151
    %v3622 = vunpack.c.l.b16 %v1152
    %v3623 = vunpack.c.l.b16 %v1153
    %v3624 = vunpack.c.l.b16 %v1154
    %v3625 = vunpack.c.l.b16 %v1155
    %v3626 = vunpack.c.l.b16 %v1156
    %v3627 = vunpack.c.l.b16 %v1157
    %v3628 = vunpack.c.l.b16 %v1158
    %v3629 = vunpack.c.l.b16 %v1159
    %v3630 = vunpack.c.l.b16 %v1160
    %v3631 = vunpack.c.l.b16 %v1161
    %v3632 = vunpack.c.l.b16 %v1162
    %v3633 = vunpack.c.l.b16 %v1163
    %v3634 = vunpack.c.l.b16 %v1164
    %v3635 = vunpack.c.l.b16 %v1165
    %v3636 = vunpack.c.l.b16 %v1166
    %v3637 = vunpack.c.l.b16 %v1167
    %v3638 = vunpack.c.l.b16 %v1168
    %v3639 = vunpack.c.l.b16 %v1169
    %v3640 = vunpack.c.l.b16 %v1170
    %v3641 = vunpack.c.l.b16 %v1171
    %v3642 = vunpack.c.l.b16 %v1172
    %v3643 = vunpack.c.l.b16 %v1173
    %v3644 = vunpack.c.l.b16 %v1174
    %v3645 = vunpack.c.l.b16 %v1175
    %v3646 = vunpack.c.l.b16 %v1176
    %v3647 = vunpack.c.l.b16 %v1177
    %v3648 = vunpack.c.l.b16 %v1178
    %v3649 = vunpack.c.l.b16 %v1179
    %v3650 = vunpack.c.l.b16 %v1180
    %v3651 = vunpack.c.l.b16 %v1181
    %v3652 = vpack.c.b16 %v2501, %v2500
    %v3653 = vpack.c.b16 %v2503, %v2502
    %v3654 = vpack.c.b16 %v2505, %v2504
    %v3655 = vpack.c.b16 %v2507, %v2506
    %v3656 = vpack.c.b16 %v2509, %v2508
    %v3657 = vpack.c.b16 %v2511, %v2510
    %v3658 = vpack.c.b16 %v2513, %v2512
    %v3659 = vpack.c.b16 %v2515, %v2514
    %v3660 = vpack.c.b16 %v2517, %v2516
    %v3661 = vpack.c.b16 %v2519, %v2518
    %v3662 = vpack.c.b16 %v2521, %v2520
    %v3663 = vpack.c.b16 %v2523, %v2522
    %v3664 = vpack.c.b16 %v2525, %v2524
    %v3665 = vpack.c.b16 %v2527, %v2526
    %v3666 = vpack.c.b16 %v2529, %v2528
    %v3667 = vpack.c.b16 %v2531, %v2530
    %v3668 = vpack.c.b16 %v2533, %v2532
    %v3669 = vpack.c.b16 %v2535, %v2534
    %v3670 = vpack.c.b16 %v2537, %v2536
    %v3671 = vpack.c.b16 %v2539, %v2538
    %v3672 = vpack.c.b16 %v2541, %v2540
    %v3673 = vpack.c.b16 %v2543, %v2542
    %v3674 = vpack.c.b16 %v2545, %v2544
    %v3675 = vpack.c.b16 %v2547, %v2546
    %v3676 = vpack.c.b16 %v2549, %v2548
    %v3677 = vpack.c.b16 %v2551, %v2550
    %v3678 = vpack.c.b16 %v2553, %v2552
    %v3679 = vpack.c.b16 %v2555, %v2554
    %v3680 = vpack.c.b16 %v2557, %v2556
    %v3681 = vpack.c.b16 %v2559, %v2558
    %v3682 = vpack.c.b16 %v2561, %v2560
    %v3683 = vpack.c.b16 %v2563, %v2562
    %v3684 = vpack.c.b16 %v2565, %v2564
    %v3685 = vpack.c.b16 %v2567, %v2566
    %v3686 = vpack.c.b16 %v2569, %v2568
    %v3687 = vpack.c.b16 %v2571, %v2570
    %v3688 = vpack.c.b16 %v2573, %v2572
    %v3689 = vpack.c.b16 %v2575, %v2574
    %v3690 = vpack.c.b16 %v2577, %v2576
    %v3691 = vpack.c.b16 %v2579, %v2578
    %v3692 = vpack.c.b16 %v2581, %v2580
    %v3693 = vpack.c.b16 %v2583, %v2582
    %v3694 = vpack.c.b16 %v2585, %v2584
    %v3695 = vpack.c.b16 %v2587, %v2586
    %v3696 = vpack.c.b16 %v2589, %v2588
    %v3697 = vpack.c.b16 %v2591, %v2590
    %v3698 = vpack.c.b16 %v2593, %v2592
    %v3699 = vpack.c.b16 %v2595, %v2594
    %v3700 = vpack.c.b16 %v2597, %v2596
    %v3701 = vpack.c.b16 %v2599, %v2598
    %v3702 = vpack.c.b16 %v2601, %v2600
    %v3703 = vpack.c.b16 %v2603, %v2602
    %v3704 = vpack.c.b16 %v2605, %v2604
    %v3705 = vpack.c.b16 %v2607, %v2606
    %v3706 = vpack.c.b16 %v2609, %v2608
    %v3707 = vpack.c.b16 %v2611, %v2610
    %v3708 = vpack.c.b16 %v2613, %v2612
    %v3709 = vpack.c.b16 %v2615, %v2614
    %v3710 = vpack.c.b16 %v2617, %v2616
    %v3711 = vpack.c.b16 %v2619, %v2618
    %v3712 = vpack.c.b16 %v2621, %v2620
    %v3713 = vpack.c.b16 %v2623, %v2622
    %v3714 = vpack.c.b16 %v2625, %v2624
    %v3715 = vpack.c.b16 %v2627, %v2626
    %v3716 = vpack.c.b16 %v2629, %v2628
    %v3717 = vpack.c.b16 %v2631, %v2630
    %v3718 = vpack.c.b16 %v2633, %v2632
    %v3719 = vpack.c.b16 %v2635, %v2634
    %v3720 = vpack.c.b16 %v2637, %v2636
    %v3721 = vpack.c.b16 %v2639, %v2638
    %v3722 = vpack.c.b16 %v2641, %v2640
    %v3723 = vpack.c.b16 %v2643, %v2642
    %v3724 = vpack.c.b16 %v2645, %v2644
    %v3725 = vpack.c.b16 %v2647, %v2646
    %v3726 = vpack.c.b16 %v2649, %v2648
    %v3727 = vpack.c.b16 %v2651, %v2650
    %v3728 = vpack.c.b16 %v2653, %v2652
    %v3729 = vpack.c.b16 %v2655, %v2654
    %v3730 = vpack.c.b16 %v2657, %v2656
    %v3731 = vpack.c.b16 %v2659, %v2658
    %v3732 = vpack.c.b16 %v2661, %v2660
    %v3733 = vpack.c.b16 %v2663, %v2662
    %v3734 = vpack.c.b16 %v2665, %v2664
    %v3735 = vpack.c.b16 %v2667, %v2666
    %v3736 = vpack.c.b16 %v2669, %v2668
    %v3737 = vpack.c.b16 %v2671, %v2670
    %v3738 = vpack.c.b16 %v2673, %v2672
    %v3739 = vpack.c.b16 %v2675, %v2674
    %v3740 = vpack.c.b16 %v2677, %v2676
    %v3741 = vpack.c.b16 %v2679, %v2678
    %v3742 = vpack.c.b16 %v2681, %v2680
    %v3743 = vpack.c.b16 %v2683, %v2682
    %v3744 = vpack.c.b16 %v2685, %v2684
    %v3745 = vpack.c.b16 %v2687, %v2686
    %v3746 = vpack.c.b16 %v2689, %v2688
    %v3747 = vpack.c.b16 %v2691, %v2690
    %v3748 = vpack.c.b16 %v2693, %v2692
    %v3749 = vpack.c.b16 %v2695, %v2694
    %v3750 = vpack.c.b16 %v2697, %v2696
    %v3751 = vpack.c.b16 %v2699, %v2698
    %v3752 = vpack.c.b16 %v2701, %v2700
    %v3753 = vpack.c.b16 %v2703, %v2702
    %v3754 = vpack.c.b16 %v2705, %v2704
    %v3755 = vpack.c.b16 %v2707, %v2706
    %v3756 = vpack.c.b16 %v2709, %v2708
    %v3757 = vpack.c.b16 %v2711, %v2710
    %v3758 = vpack.c.b16 %v2713, %v2712
    %v3759 = vpack.c.b16 %v2715, %v2714
    %v3760 = vpack.c.b16 %v2717, %v2716
    %v3761 = vpack.c.b16 %v2719, %v2718
    %v3762 = vpack.c.b16 %v2721, %v2720
    %v3763 = vpack.c.b16 %v2723, %v2722
    %v3764 = vpack.c.b16 %v2725, %v2724
    %v3765 = vpack.c.b16 %v2727, %v2726
    %v3766 = vpack.c.b16 %v2729, %v2728
    %v3767 = vpack.c.b16 %v2731, %v2730
    %v3768 = vpack.c.b16 %v2733, %v2732
    %v3769 = vpack.c.b16 %v2735, %v2734
    %v3770 = vpack.c.b16 %v2737, %v2736
    %v3771 = vpack.c.b16 %v2739, %v2738
    %v3772 = vpack.c.b16 %v2741, %v2740
    %v3773 = vpack.c.b16 %v2743, %v2742
    %v3774 = vpack.c.b16 %v2745, %v2744
    %v3775 = vpack.c.b16 %v2747, %v2746
    %v3776 = vpack.c.b16 %v2749, %v2748
    %v3777 = vpack.c.b16 %v2751, %v2750
    %v3778 = vpack.c.b16 %v2753, %v2752
    %v3779 = vpack.c.b16 %v2755, %v2754
    %v3780 = vpack.c.b16 %v2757, %v2756
    %v3781 = vpack.c.b16 %v2759, %v2758
    %v3782 = vpack.c.b16 %v2761, %v2760
    %v3783 = vpack.c.b16 %v2763, %v2762
    %v3784 = vpack.c.b16 %v2765, %v2764
    %v3785 = vpack.c.b16 %v2767, %v2766
    %v3786 = vpack.c.b16 %v2769, %v2768
    %v3787 = vpack.c.b16 %v2771, %v2770
    %v3788 = vpack.c.b16 %v2773, %v2772
    %v3789 = vpack.c.b16 %v2775, %v2774
    %v3790 = vpack.c.b16 %v2777, %v2776
    %v3791 = vpack.c.b16 %v2779, %v2778
    %v3792 = vpack.c.b16 %v2781, %v2780
    %v3793 = vpack.c.b16 %v2783, %v2782
    %v3794 = vpack.c.b16 %v2785, %v2784
    %v3795 = vpack.c.b16 %v2787, %v2786
    %v3796 = vpack.c.b16 %v2789, %v2788
    %v3797 = vpack.c.b16 %v2791, %v2790
    %v3798 = vpack.c.b16 %v2793, %v2792
    %v3799 = vpack.c.b16 %v2795, %v2794
    %v3800 = vpack.c.b16 %v2797, %v2796
    %v3801 = vpack.c.b16 %v2799, %v2798
    %v3802 = vpack.c.b16 %v2801, %v2800
    %v3803 = vpack.c.b16 %v2803, %v2802
    %v3804 = vpack.c.b16 %v2805, %v2804
    %v3805 = vpack.c.b16 %v2807, %v2806
    %v3806 = vpack.c.b16 %v2809, %v2808
    %v3807 = vpack.c.b16 %v2811, %v2810
    %v3808 = vpack.c.b16 %v2813, %v2812
    %v3809 = vpack.c.b16 %v2815, %v2814
    %v3810 = vpack.c.b16 %v2817, %v2816
    %v3811 = vpack.c.b16 %v2819, %v2818
    %v3812 = vpack.c.b16 %v2821, %v2820
    %v3813 = vpack.c.b16 %v2823, %v2822
    %v3814 = vpack.c.b16 %v2825, %v2824
    %v3815 = vpack.c.b16 %v2827, %v2826
    %v3816 = vpack.c.b16 %v2829, %v2828
    %v3817 = vpack.c.b16 %v2831, %v2830
    %v3818 = vpack.c.b16 %v2833, %v2832
    %v3819 = vpack.c.b16 %v2835, %v2834
    %v3820 = vpack.c.b16 %v2837, %v2836
    %v3821 = vpack.c.b16 %v2839, %v2838
    %v3822 = vpack.c.b16 %v2841, %v2840
    %v3823 = vpack.c.b16 %v2843, %v2842
    %v3824 = vpack.c.b16 %v2845, %v2844
    %v3825 = vpack.c.b16 %v2847, %v2846
    %v3826 = vpack.c.b16 %v2849, %v2848
    %v3827 = vpack.c.b16 %v2851, %v2850
    %v3828 = vpack.c.b16 %v2853, %v2852
    %v3829 = vpack.c.b16 %v2855, %v2854
    %v3830 = vpack.c.b16 %v2857, %v2856
    %v3831 = vpack.c.b16 %v2859, %v2858
    %v3832 = vpack.c.b16 %v2861, %v2860
    %v3833 = vpack.c.b16 %v2863, %v2862
    %v3834 = vpack.c.b16 %v2865, %v2864
    %v3835 = vpack.c.b16 %v2867, %v2866
    %v3836 = vpack.c.b16 %v2869, %v2868
    %v3837 = vpack.c.b16 %v2871, %v2870
    %v3838 = vpack.c.b16 %v2873, %v2872
    %v3839 = vpack.c.b16 %v2875, %v2874
    %v3840 = vpack.c.b16 %v2877, %v2876
    %v3841 = vpack.c.b16 %v2879, %v2878
    %v3842 = vpack.c.b16 %v2881, %v2880
    %v3843 = vpack.c.b16 %v2883, %v2882
    %v3844 = vpack.c.b16 %v2885, %v2884
    %v3845 = vpack.c.b16 %v2887, %v2886
    %v3846 = vpack.c.b16 %v2889, %v2888
    %v3847 = vpack.c.b16 %v2891, %v2890
    %v3848 = vpack.c.b16 %v2893, %v2892
    %v3849 = vpack.c.b16 %v2895, %v2894
    %v3850 = vpack.c.b16 %v2897, %v2896
    %v3851 = vpack.c.b16 %v2899, %v2898
    %v3852 = vpack.c.b16 %v2901, %v2900
    %v3853 = vpack.c.b16 %v2903, %v2902
    %v3854 = vpack.c.b16 %v2905, %v2904
    %v3855 = vpack.c.b16 %v2907, %v2906
    %v3856 = vpack.c.b16 %v2909, %v2908
    %v3857 = vpack.c.b16 %v2911, %v2910
    %v3858 = vpack.c.b16 %v2913, %v2912
    %v3859 = vpack.c.b16 %v2915, %v2914
    %v3860 = vpack.c.b16 %v2917, %v2916
    %v3861 = vpack.c.b16 %v2919, %v2918
    %v3862 = vpack.c.b16 %v2921, %v2920
    %v3863 = vpack.c.b16 %v2923, %v2922
    %v3864 = vpack.c.b16 %v2925, %v2924
    %v3865 = vpack.c.b16 %v2927, %v2926
    %v3866 = vpack.c.b16 %v2929, %v2928
    %v3867 = vpack.c.b16 %v2931, %v2930
    %v3868 = vpack.c.b16 %v2933, %v2932
    %v3869 = vpack.c.b16 %v2935, %v2934
    %v3870 = vpack.c.b16 %v2937, %v2936
    %v3871 = vpack.c.b16 %v2939, %v2938
    %v3872 = vpack.c.b16 %v2941, %v2940
    %v3873 = vpack.c.b16 %v2943, %v2942
    %v3874 = vpack.c.b16 %v2945, %v2944
    %v3875 = vpack.c.b16 %v2947, %v2946
    %v3876 = vpack.c.b16 %v2949, %v2948
    %v3877 = vpack.c.b16 %v2951, %v2950
    %v3878 = vpack.c.b16 %v2953, %v2952
    %v3879 = vpack.c.b16 %v2955, %v2954
    %v3880 = vpack.c.b16 %v2957, %v2956
    %v3881 = vpack.c.b16 %v2959, %v2958
    %v3882 = vpack.c.b16 %v2961, %v2960
    %v3883 = vpack.c.b16 %v2963, %v2962
    %v3884 = vpack.c.b16 %v2965, %v2964
    %v3885 = vpack.c.b16 %v2967, %v2966
    %v3886 = vpack.c.b16 %v2969, %v2968
    %v3887 = vpack.c.b16 %v2971, %v2970
    %v3888 = vpack.c.b16 %v2973, %v2972
    %v3889 = vpack.c.b16 %v2975, %v2974
    %v3890 = vpack.c.b16 %v2977, %v2976
    %v3891 = vpack.c.b16 %v2979, %v2978
    %v3892 = vpack.c.b16 %v2981, %v2980
    %v3893 = vpack.c.b16 %v2983, %v2982
    %v3894 = vpack.c.b16 %v2985, %v2984
    %v3895 = vpack.c.b16 %v2987, %v2986
    %v3896 = vpack.c.b16 %v2989, %v2988
    %v3897 = vpack.c.b16 %v2991, %v2990
    %v3898 = vpack.c.b16 %v2993, %v2992
    %v3899 = vpack.c.b16 %v2995, %v2994
    %v3900 = vpack.c.b16 %v2997, %v2996
    %v3901 = vpack.c.b16 %v2999, %v2998
    %v3902 = vpack.c.b16 %v3001, %v3000
    %v3903 = vpack.c.b16 %v3003, %v3002
    %v3904 = vpack.c.b16 %v3005, %v3004
    %v3905 = vpack.c.b16 %v3007, %v3006
    %v3906 = vpack.c.b16 %v3009, %v3008
    %v3907 = vpack.c.b16 %v3011, %v3010
    %v3908 = vpack.c.b16 %v3013, %v3012
    %v3909 = vpack.c.b16 %v3015, %v3014
    %v3910 = vpack.c.b16 %v3017, %v3016
    %v3911 = vpack.c.b16 %v3019, %v3018
    %v3912 = vpack.c.b16 %v3021, %v3020
    %v3913 = vpack.c.b16 %v3023, %v3022
    %v3914 = vpack.c.b16 %v3025, %v3024
    %v3915 = vpack.c.b16 %v3027, %v3026
    %v3916 = vpack.c.b16 %v3029, %v3028
    %v3917 = vpack.c.b16 %v3031, %v3030
    %v3918 = vpack.c.b16 %v3033, %v3032
    %v3919 = vpack.c.b16 %v3035, %v3034
    %v3920 = vpack.c.b16 %v3037, %v3036
    %v3921 = vpack.c.b16 %v3039, %v3038
    %v3922 = vpack.c.b16 %v3041, %v3040
    %v3923 = vpack.c.b16 %v3043, %v3042
    %v3924 = vpack.c.b16 %v3045, %v3044
    %v3925 = vpack.c.b16 %v3047, %v3046
    %v3926 = vpack.c.b16 %v3049, %v3048
    %v3927 = vpack.c.b16 %v3051, %v3050
    %v3928 = vpack.c.b16 %v3053, %v3052
    %v3929 = vpack.c.b16 %v3055, %v3054
    %v3930 = vpack.c.b16 %v3057, %v3056
    %v3931 = vpack.c.b16 %v3059, %v3058
    %v3932 = vpack.c.b16 %v3061, %v3060
    %v3933 = vpack.c.b16 %v3063, %v3062
    %v3934 = vpack.c.b16 %v3065, %v3064
    %v3935 = vpack.c.b16 %v3067, %v3066
    %v3936 = vpack.c.b16 %v3069, %v3068
    %v3937 = vpack.c.b16 %v3071, %v3070
    %v3938 = vpack.c.b16 %v3073, %v3072
    %v3939 = vpack.c.b16 %v3075, %v3074
    %v3940 = vpack.c.b16 %v3077, %v3076
    %v3941 = vpack.c.b16 %v3079, %v3078
    %v3942 = vpack.c.b16 %v3081, %v3080
    %v3943 = vpack.c.b16 %v3083, %v3082
    %v3944 = vpack.c.b16 %v3085, %v3084
    %v3945 = vpack.c.b16 %v3087, %v3086
    %v3946 = vpack.c.b16 %v3089, %v3088
    %v3947 = vpack.c.b16 %v3091, %v3090
    %v3948 = vpack.c.b16 %v3093, %v3092
    %v3949 = vpack.c.b16 %v3095, %v3094
    %v3950 = vpack.c.b16 %v3097, %v3096
    %v3951 = vpack.c.b16 %v3099, %v3098
    %v3952 = vpack.c.b16 %v3101, %v3100
    %v3953 = vpack.c.b16 %v3103, %v3102
    %v3954 = vpack.c.b16 %v3105, %v3104
    %v3955 = vpack.c.b16 %v3107, %v3106
    %v3956 = vpack.c.b16 %v3109, %v3108
    %v3957 = vpack.c.b16 %v3111, %v3110
    %v3958 = vpack.c.b16 %v3113, %v3112
    %v3959 = vpack.c.b16 %v3115, %v3114
    %v3960 = vpack.c.b16 %v3117, %v3116
    %v3961 = vpack.c.b16 %v3119, %v3118
    %v3962 = vpack.c.b16 %v3121, %v3120
    %v3963 = vpack.c.b16 %v3123, %v3122
    %v3964 = vpack.c.b16 %v3125, %v3124
    %v3965 = vpack.c.b16 %v3127, %v3126
    %v3966 = vpack.c.b16 %v3129, %v3128
    %v3967 = vpack.c.b16 %v3131, %v3130
    %v3968 = vpack.c.b16 %v3133, %v3132
    %v3969 = vpack.c.b16 %v3135, %v3134
    %v3970 = vpack.c.b16 %v3137, %v3136
    %v3971 = vpack.c.b16 %v3139, %v3138
    %v3972 = vpack.c.b16 %v3141, %v3140
    %v3973 = vpack.c.b16 %v3143, %v3142
    %v3974 = vpack.c.b16 %v3145, %v3144
    %v3975 = vpack.c.b16 %v3147, %v3146
    %v3976 = vpack.c.b16 %v3149, %v3148
    %v3977 = vpack.c.b16 %v3151, %v3150
    %v3978 = vpack.c.b16 %v3153, %v3152
    %v3979 = vpack.c.b16 %v3155, %v3154
    %v3980 = vpack.c.b16 %v3157, %v3156
    %v3981 = vpack.c.b16 %v3159, %v3158
    %v3982 = vpack.c.b16 %v3161, %v3160
    %v3983 = vpack.c.b16 %v3163, %v3162
    %v3984 = vpack.c.b16 %v3165, %v3164
    %v3985 = vpack.c.b16 %v3167, %v3166
    %v3986 = vpack.c.b16 %v3169, %v3168
    %v3987 = vpack.c.b16 %v3171, %v3170
    %v3988 = vpack.c.b16 %v3173, %v3172
    %v3989 = vpack.c.b16 %v3175, %v3174
    %v3990 = vpack.c.b16 %v3177, %v3176
    %v3991 = vpack.c.b16 %v3179, %v3178
    %v3992 = vpack.c.b16 %v3181, %v3180
    %v3993 = vpack.c.b16 %v3183, %v3182
    %v3994 = vpack.c.b16 %v3185, %v3184
    %v3995 = vpack.c.b16 %v3187, %v3186
    %v3996 = vpack.c.b16 %v3189, %v3188
    %v3997 = vpack.c.b16 %v3191, %v3190
    %v3998 = vpack.c.b16 %v3193, %v3192
    %v3999 = vpack.c.b16 %v3195, %v3194
    %v4000 = vpack.c.b16 %v3197, %v3196
    %v4001 = vpack.c.b16 %v3199, %v3198
    %v4002 = vpack.c.b16 %v3201, %v3200
    %v4003 = vpack.c.b16 %v3203, %v3202
    %v4004 = vpack.c.b16 %v3205, %v3204
    %v4005 = vpack.c.b16 %v3207, %v3206
    %v4006 = vpack.c.b16 %v3209, %v3208
    %v4007 = vpack.c.b16 %v3211, %v3210
    %v4008 = vpack.c.b16 %v3213, %v3212
    %v4009 = vpack.c.b16 %v3215, %v3214
    %v4010 = vpack.c.b16 %v3217, %v3216
    %v4011 = vpack.c.b16 %v3219, %v3218
    %v4012 = vpack.c.b16 %v3221, %v3220
    %v4013 = vpack.c.b16 %v3223, %v3222
    %v4014 = vpack.c.b16 %v3225, %v3224
    %v4015 = vpack.c.b16 %v3227, %v3226
    %v4016 = vpack.c.b16 %v3229, %v3228
    %v4017 = vpack.c.b16 %v3231, %v3230
    %v4018 = vpack.c.b16 %v3233, %v3232
    %v4019 = vpack.c.b16 %v3235, %v3234
    %v4020 = vpack.c.b16 %v3237, %v3236
    %v4021 = vpack.c.b16 %v3239, %v3238
    %v4022 = vpack.c.b16 %v3241, %v3240
    %v4023 = vpack.c.b16 %v3243, %v3242
    %v4024 = vpack.c.b16 %v3245, %v3244
    %v4025 = vpack.c.b16 %v3247, %v3246
    %v4026 = vpack.c.b16 %v3249, %v3248
    %v4027 = vpack.c.b16 %v3251, %v3250
    %v4028 = vpack.c.b16 %v3253, %v3252
    %v4029 = vpack.c.b16 %v3255, %v3254
    %v4030 = vpack.c.b16 %v3257, %v3256
    %v4031 = vpack.c.b16 %v3259, %v3258
    %v4032 = vpack.c.b16 %v3261, %v3260
    %v4033 = vpack.c.b16 %v3263, %v3262
    %v4034 = vpack.c.b16 %v3265, %v3264
    %v4035 = vpack.c.b16 %v3267, %v3266
    %v4036 = vpack.c.b16 %v3269, %v3268
    %v4037 = vpack.c.b16 %v3271, %v3270
    %v4038 = vpack.c.b16 %v3273, %v3272
    %v4039 = vpack.c.b16 %v3275, %v3274
    %v4040 = vpack.c.b16 %v3277, %v3276
    %v4041 = vpack.c.b16 %v3279, %v3278
    %v4042 = vpack.c.b16 %v3281, %v3280
    %v4043 = vpack.c.b16 %v3283, %v3282
    %v4044 = vpack.c.b16 %v3285, %v3284
    %v4045 = vpack.c.b16 %v3287, %v3286
    %v4046 = vpack.c.b16 %v3289, %v3288
    %v4047 = vpack.c.b16 %v3291, %v3290
    %v4048 = vpack.c.b16 %v3293, %v3292
    %v4049 = vpack.c.b16 %v3295, %v3294
    %v4050 = vpack.c.b16 %v3297, %v3296
    %v4051 = vpack.c.b16 %v3299, %v3298
    %v4052 = vpack.c.b16 %v3301, %v3300
    %v4053 = vpack.c.b16 %v3303, %v3302
    %v4054 = vpack.c.b16 %v3305, %v3304
    %v4055 = vpack.c.b16 %v3307, %v3306
    %v4056 = vpack.c.b16 %v3309, %v3308
    %v4057 = vpack.c.b16 %v3311, %v3310
    %v4058 = vpack.c.b16 %v3313, %v3312
    %v4059 = vpack.c.b16 %v3315, %v3314
    %v4060 = vpack.c.b16 %v3317, %v3316
    %v4061 = vpack.c.b16 %v3319, %v3318
    %v4062 = vpack.c.b16 %v3321, %v3320
    %v4063 = vpack.c.b16 %v3323, %v3322
    %v4064 = vpack.c.b16 %v3325, %v3324
    %v4065 = vpack.c.b16 %v3327, %v3326
    %v4066 = vpack.c.b16 %v3329, %v3328
    %v4067 = vpack.c.b16 %v3331, %v3330
    %v4068 = vpack.c.b16 %v3333, %v3332
    %v4069 = vpack.c.b16 %v3335, %v3334
    %v4070 = vpack.c.b16 %v3337, %v3336
    %v4071 = vpack.c.b16 %v3339, %v3338
    %v4072 = vpack.c.b16 %v3341, %v3340
    %v4073 = vpack.c.b16 %v3343, %v3342
    %v4074 = vpack.c.b16 %v3345, %v3344
    %v4075 = vpack.c.b16 %v3347, %v3346
    %v4076 = vpack.c.b16 %v3349, %v3348
    %v4077 = vpack.c.b16 %v3351, %v3350
    %v4078 = vpack.c.b16 %v3353, %v3352
    %v4079 = vpack.c.b16 %v3355, %v3354
    %v4080 = vpack.c.b16 %v3357, %v3356
    %v4081 = vpack.c.b16 %v3359, %v3358
    %v4082 = vpack.c.b16 %v3361, %v3360
    %v4083 = vpack.c.b16 %v3363, %v3362
    %v4084 = vpack.c.b16 %v3365, %v3364
    %v4085 = vpack.c.b16 %v3367, %v3366
    %v4086 = vpack.c.b16 %v3369, %v3368
    %v4087 = vpack.c.b16 %v3371, %v3370
    %v4088 = vpack.c.b16 %v3373, %v3372
    %v4089 = vpack.c.b16 %v3375, %v3374
    %v4090 = vpack.c.b16 %v3377, %v3376
    %v4091 = vpack.c.b16 %v3379, %v3378
    %v4092 = vpack.c.b16 %v3381, %v3380
    %v4093 = vpack.c.b16 %v3383, %v3382
    %v4094 = vpack.c.b16 %v3385, %v3384
    %v4095 = vpack.c.b16 %v3387, %v3386
    %v4096 = vpack.c.b16 %v3389, %v3388
    %v4097 = vpack.c.b16 %v3391, %v3390
    %v4098 = vpack.c.b16 %v3393, %v3392
    %v4099 = vpack.c.b16 %v3395, %v3394
    %v4100 = vpack.c.b16 %v3397, %v3396
    %v4101 = vpack.c.b16 %v3399, %v3398
    %v4102 = vpack.c.b16 %v3401, %v3400
    %v4103 = vpack.c.b16 %v3403, %v3402
    %v4104 = vpack.c.b16 %v3405, %v3404
    %v4105 = vpack.c.b16 %v3407, %v3406
    %v4106 = vpack.c.b16 %v3409, %v3408
    %v4107 = vpack.c.b16 %v3411, %v3410
    %v4108 = vpack.c.b16 %v3413, %v3412
    %v4109 = vpack.c.b16 %v3415, %v3414
    %v4110 = vpack.c.b16 %v3417, %v3416
    %v4111 = vpack.c.b16 %v3419, %v3418
    %v4112 = vpack.c.b16 %v3421, %v3420
    %v4113 = vpack.c.b16 %v3423, %v3422
    %v4114 = vpack.c.b16 %v3425, %v3424
    %v4115 = vpack.c.b16 %v3427, %v3426
    %v4116 = vpack.c.b16 %v3429, %v3428
    %v4117 = vpack.c.b16 %v3431, %v3430
    %v4118 = vpack.c.b16 %v3433, %v3432
    %v4119 = vpack.c.b16 %v3435, %v3434
    %v4120 = vpack.c.b16 %v3437, %v3436
    %v4121 = vpack.c.b16 %v3439, %v3438
    %v4122 = vpack.c.b16 %v3441, %v3440
    %v4123 = vpack.c.b16 %v3443, %v3442
    %v4124 = vpack.c.b16 %v3445, %v3444
    %v4125 = vpack.c.b16 %v3447, %v3446
    %v4126 = vpack.c.b16 %v3449, %v3448
    %v4127 = vpack.c.b16 %v3451, %v3450
    %v4128 = vpack.c.b16 %v3453, %v3452
    %v4129 = vpack.c.b16 %v3455, %v3454
    %v4130 = vpack.c.b16 %v3457, %v3456
    %v4131 = vpack.c.b16 %v3459, %v3458
    %v4132 = vpack.c.b16 %v3461, %v3460
    %v4133 = vpack.c.b16 %v3463, %v3462
    %v4134 = vpack.c.b16 %v3465, %v3464
    %v4135 = vpack.c.b16 %v3467, %v3466
    %v4136 = vpack.c.b16 %v3469, %v3468
    %v4137 = vpack.c.b16 %v3471, %v3470
    %v4138 = vpack.c.b16 %v3473, %v3472
    %v4139 = vpack.c.b16 %v3475, %v3474
    %v4140 = vpack.c.b16 %v3477, %v3476
    %v4141 = vpack.c.b16 %v3479, %v3478
    %v4142 = vpack.c.b16 %v3481, %v3480
    %v4143 = vpack.c.b16 %v3483, %v3482
    %v4144 = vpack.c.b16 %v3485, %v3484
    %v4145 = vpack.c.b16 %v3487, %v3486
    %v4146 = vpack.c.b16 %v3489, %v3488
    %v4147 = vpack.c.b16 %v3491, %v3490
    %v4148 = vpack.c.b16 %v3493, %v3492
    %v4149 = vpack.c.b16 %v3495, %v3494
    %v4150 = vpack.c.b16 %v3497, %v3496
    %v4151 = vpack.c.b16 %v3499, %v3498
    %v4152 = vpack.c.b16 %v3501, %v3500
    %v4153 = vpack.c.b16 %v3503, %v3502
    %v4154 = vpack.c.b16 %v3505, %v3504
    %v4155 = vpack.c.b16 %v3507, %v3506
    %v4156 = vpack.c.b16 %v3509, %v3508
    %v4157 = vpack.c.b16 %v3511, %v3510
    %v4158 = vpack.c.b16 %v3513, %v3512
    %v4159 = vpack.c.b16 %v3515, %v3514
    %v4160 = vpack.c.b16 %v3517, %v3516
    %v4161 = vpack.c.b16 %v3519, %v3518
    %v4162 = vpack.c.b16 %v3521, %v3520
    %v4163 = vpack.c.b16 %v3523, %v3522
    %v4164 = vpack.c.b16 %v3525, %v3524
    %v4165 = vpack.c.b16 %v3527, %v3526
    %v4166 = vpack.c.b16 %v3529, %v3528
    %v4167 = vpack.c.b16 %v3531, %v3530
    %v4168 = vpack.c.b16 %v3533, %v3532
    %v4169 = vpack.c.b16 %v3535, %v3534
    %v4170 = vpack.c.b16 %v3537, %v3536
    %v4171 = vpack.c.b16 %v3539, %v3538
    %v4172 = vpack.c.b16 %v3541, %v3540
    %v4173 = vpack.c.b16 %v3543, %v3542
    %v4174 = vpack.c.b16 %v3545, %v3544
    %v4175 = vpack.c.b16 %v3547, %v3546
    %v4176 = vpack.c.b16 %v3549, %v3548
    %v4177 = vpack.c.b16 %v3551, %v3550
    %v4178 = vpack.c.b16 %v3553, %v3552
    %v4179 = vpack.c.b16 %v3555, %v3554
    %v4180 = vpack.c.b16 %v3557, %v3556
    %v4181 = vpack.c.b16 %v3559, %v3558
    %v4182 = vpack.c.b16 %v3561, %v3560
    %v4183 = vpack.c.b16 %v3563, %v3562
    %v4184 = vpack.c.b16 %v3565, %v3564
    %v4185 = vpack.c.b16 %v3567, %v3566
    %v4186 = vpack.c.b16 %v3569, %v3568
    %v4187 = vpack.c.b16 %v3571, %v3570
    %v4188 = vpack.c.b16 %v3573, %v3572
    %v4189 = vpack.c.b16 %v3575, %v3574
    %v4190 = vpack.c.b16 %v3577, %v3576
    %v4191 = vpack.c.b16 %v3579, %v3578
    %v4192 = vpack.c.b16 %v3581, %v3580
    %v4193 = vpack.c.b16 %v3583, %v3582
    %v4194 = vpack.c.b16 %v3585, %v3584
    %v4195 = vpack.c.b16 %v3587, %v3586
    %v4196 = vpack.c.b16 %v3589, %v3588
    %v4197 = vpack.c.b16 %v3591, %v3590
    %v4198 = vpack.c.b16 %v3593, %v3592
    %v4199 = vpack.c.b16 %v3595, %v3594
    %v4200 = vpack.c.b16 %v3597, %v3596
    %v4201 = vpack.c.b16 %v3599, %v3598
    %v4202 = vpack.c.b16 %v3601, %v3600
    %v4203 = vpack.c.b16 %v3603, %v3602
    %v4204 = vpack.c.b16 %v3605, %v3604
    %v4205 = vpack.c.b16 %v3607, %v3606
    %v4206 = vpack.c.b16 %v3609, %v3608
    %v4207 = vpack.c.b16 %v3611, %v3610
    %v4208 = vpack.c.b16 %v3613, %v3612
    %v4209 = vpack.c.b16 %v3615, %v3614
    %v4210 = vpack.c.b16 %v3617, %v3616
    %v4211 = vpack.c.b16 %v3619, %v3618
    %v4212 = vpack.c.b16 %v3621, %v3620
    %v4213 = vpack.c.b16 %v3623, %v3622
    %v4214 = vpack.c.b16 %v3625, %v3624
    %v4215 = vpack.c.b16 %v3627, %v3626
    %v4216 = vpack.c.b16 %v3629, %v3628
    %v4217 = vpack.c.b16 %v3631, %v3630
    %v4218 = vpack.c.b16 %v3633, %v3632
    %v4219 = vpack.c.b16 %v3635, %v3634
    %v4220 = vpack.c.b16 %v3637, %v3636
    %v4221 = vpack.c.b16 %v3639, %v3638
    %v4222 = vpack.c.b16 %v3641, %v3640
    %v4223 = vpack.c.b16 %v3643, %v3642
    %v4224 = vpack.c.b16 %v3645, %v3644
    %v4225 = vpack.c.b16 %v3647, %v3646
    %v4226 = vpack.c.b16 %v3649, %v3648
    %v4227 = vpack.c.b16 %v3651, %v3650
    %4804 = vmatpush.bf16.msra.mxu0 %v3659
    %4805 = vmatpush.bf16.msra.mxu0 %v3658
    %4806 = vmatpush.bf16.msra.mxu0 %v3657
    %4807 = vmatpush.bf16.msra.mxu0 %v3656
    %4808 = vmatpush.bf16.msra.mxu0 %v3655
    %4809 = vmatpush.bf16.msra.mxu0 %v3654
    %4810 = vmatpush.bf16.msra.mxu0 %v3653
    %4811 = vmatpush.bf16.msra.mxu0 %v3652
    %4812 = vmatmul.bf16.gmra.mxu0 %v1188
    %v4813 = vpop.f32.mrf.mxu0
    %v4814 = vadd.f32 %v1184, %v4813
    %v4815 = vpop.f32.mrf.mxu0
    %4816 = vdwg.mxu0
    %4817 = vmatpush.bf16.msra.mxu0 %v3667
    %4818 = vmatpush.bf16.msra.mxu0 %v3666
    %4819 = vmatpush.bf16.msra.mxu0 %v3665
    %4820 = vmatpush.bf16.msra.mxu0 %v3664
    %4821 = vmatpush.bf16.msra.mxu0 %v3663
    %4822 = vmatpush.bf16.msra.mxu0 %v3662
    %4823 = vmatpush.bf16.msra.mxu0 %v3661
    %4824 = vmatpush.bf16.msra.mxu0 %v3660
    %4825 = vmatmul.bf16.gmra.mxu0 %v1189
    %v4826 = vpop.f32.mrf.mxu0
    %v4827 = vadd.f32 %v4814, %v4826
    %v4828 = vpop.f32.mrf.mxu0
    %4829 = vdwg.mxu0
    %4830 = vmatpush.bf16.msra.mxu0 %v3675
    %4831 = vmatpush.bf16.msra.mxu0 %v3674
    %4832 = vmatpush.bf16.msra.mxu0 %v3673
    %4833 = vmatpush.bf16.msra.mxu0 %v3672
    %4834 = vmatpush.bf16.msra.mxu0 %v3671
    %4835 = vmatpush.bf16.msra.mxu0 %v3670
    %4836 = vmatpush.bf16.msra.mxu0 %v3669
    %4837 = vmatpush.bf16.msra.mxu0 %v3668
    %4838 = vmatmul.bf16.gmra.mxu0 %v1190
    %v4839 = vpop.f32.mrf.mxu0
    %v4840 = vadd.f32 %v4827, %v4839
    %v4841 = vpop.f32.mrf.mxu0
    %4842 = vdwg.mxu0
    %4843 = vmatpush.bf16.msra.mxu0 %v3683
    %4844 = vmatpush.bf16.msra.mxu0 %v3682
    %4845 = vmatpush.bf16.msra.mxu0 %v3681
    %4846 = vmatpush.bf16.msra.mxu0 %v3680
    %4847 = vmatpush.bf16.msra.mxu0 %v3679
    %4848 = vmatpush.bf16.msra.mxu0 %v3678
    %4849 = vmatpush.bf16.msra.mxu0 %v3677
    %4850 = vmatpush.bf16.msra.mxu0 %v3676
    %4851 = vmatmul.bf16.gmra.mxu0 %v1191
    %v4852 = vpop.f32.mrf.mxu0
    %v4853 = vadd.f32 %v4840, %v4852
    %v4854 = vpop.f32.mrf.mxu0
    %4855 = vdwg.mxu0
    %4856 = vmatpush.bf16.msra.mxu0 %v3691
    %4857 = vmatpush.bf16.msra.mxu0 %v3690
    %4858 = vmatpush.bf16.msra.mxu0 %v3689
    %4859 = vmatpush.bf16.msra.mxu0 %v3688
    %4860 = vmatpush.bf16.msra.mxu0 %v3687
    %4861 = vmatpush.bf16.msra.mxu0 %v3686
    %4862 = vmatpush.bf16.msra.mxu0 %v3685
    %4863 = vmatpush.bf16.msra.mxu0 %v3684
    %4864 = vmatmul.bf16.gmra.mxu0 %v1192
    %v4865 = vpop.f32.mrf.mxu0
    %v4866 = vadd.f32 %v4853, %v4865
    %v4867 = vpop.f32.mrf.mxu0
    %4868 = vdwg.mxu0
    %4869 = vmatpush.bf16.msra.mxu0 %v3699
    %4870 = vmatpush.bf16.msra.mxu0 %v3698
    %4871 = vmatpush.bf16.msra.mxu0 %v3697
    %4872 = vmatpush.bf16.msra.mxu0 %v3696
    %4873 = vmatpush.bf16.msra.mxu0 %v3695
    %4874 = vmatpush.bf16.msra.mxu0 %v3694
    %4875 = vmatpush.bf16.msra.mxu0 %v3693
    %4876 = vmatpush.bf16.msra.mxu0 %v3692
    %4877 = vmatmul.bf16.gmra.mxu0 %v1193
    %v4878 = vpop.f32.mrf.mxu0
    %v4879 = vadd.f32 %v4866, %v4878
    %v4880 = vpop.f32.mrf.mxu0
    %4881 = vdwg.mxu0
    %4882 = vmatpush.bf16.msra.mxu0 %v3707
    %4883 = vmatpush.bf16.msra.mxu0 %v3706
    %4884 = vmatpush.bf16.msra.mxu0 %v3705
    %4885 = vmatpush.bf16.msra.mxu0 %v3704
    %4886 = vmatpush.bf16.msra.mxu0 %v3703
    %4887 = vmatpush.bf16.msra.mxu0 %v3702
    %4888 = vmatpush.bf16.msra.mxu0 %v3701
    %4889 = vmatpush.bf16.msra.mxu0 %v3700
    %4890 = vmatmul.bf16.gmra.mxu0 %v1194
    %v4891 = vpop.f32.mrf.mxu0
    %v4892 = vadd.f32 %v4879, %v4891
    %v4893 = vpop.f32.mrf.mxu0
    %4894 = vdwg.mxu0
    %4895 = vmatpush.bf16.msra.mxu0 %v3715
    %4896 = vmatpush.bf16.msra.mxu0 %v3714
    %4897 = vmatpush.bf16.msra.mxu0 %v3713
    %4898 = vmatpush.bf16.msra.mxu0 %v3712
    %4899 = vmatpush.bf16.msra.mxu0 %v3711
    %4900 = vmatpush.bf16.msra.mxu0 %v3710
    %4901 = vmatpush.bf16.msra.mxu0 %v3709
    %4902 = vmatpush.bf16.msra.mxu0 %v3708
    %4903 = vmatmul.bf16.gmra.mxu0 %v1195
    %v4904 = vpop.f32.mrf.mxu0
    %v4905 = vadd.f32 %v4892, %v4904
    %v4906 = vpop.f32.mrf.mxu0
    %4907 = vdwg.mxu0
    %4908 = vmatpush.bf16.msra.mxu0 %v3723
    %4909 = vmatpush.bf16.msra.mxu0 %v3722
    %4910 = vmatpush.bf16.msra.mxu0 %v3721
    %4911 = vmatpush.bf16.msra.mxu0 %v3720
    %4912 = vmatpush.bf16.msra.mxu0 %v3719
    %4913 = vmatpush.bf16.msra.mxu0 %v3718
    %4914 = vmatpush.bf16.msra.mxu0 %v3717
    %4915 = vmatpush.bf16.msra.mxu0 %v3716
    %4916 = vmatmul.bf16.gmra.mxu0 %v1198
    %v4917 = vpop.f32.mrf.mxu0
    %v4918 = vadd.f32 %v4905, %v4917
    %v4919 = vpop.f32.mrf.mxu0
    %4920 = vdwg.mxu0
    %4921 = vmatpush.bf16.msra.mxu0 %v3731
    %4922 = vmatpush.bf16.msra.mxu0 %v3730
    %4923 = vmatpush.bf16.msra.mxu0 %v3729
    %4924 = vmatpush.bf16.msra.mxu0 %v3728
    %4925 = vmatpush.bf16.msra.mxu0 %v3727
    %4926 = vmatpush.bf16.msra.mxu0 %v3726
    %4927 = vmatpush.bf16.msra.mxu0 %v3725
    %4928 = vmatpush.bf16.msra.mxu0 %v3724
    %4929 = vmatmul.bf16.gmra.mxu0 %v1199
    %v4930 = vpop.f32.mrf.mxu0
    %v4931 = vadd.f32 %v4918, %v4930
    %v4932 = vpop.f32.mrf.mxu0
    %4933 = vdwg.mxu0
    %4934 = vmatpush.bf16.msra.mxu0 %v3739
    %4935 = vmatpush.bf16.msra.mxu0 %v3738
    %4936 = vmatpush.bf16.msra.mxu0 %v3737
    %4937 = vmatpush.bf16.msra.mxu0 %v3736
    %4938 = vmatpush.bf16.msra.mxu0 %v3735
    %4939 = vmatpush.bf16.msra.mxu0 %v3734
    %4940 = vmatpush.bf16.msra.mxu0 %v3733
    %4941 = vmatpush.bf16.msra.mxu0 %v3732
    %4942 = vmatmul.bf16.gmra.mxu0 %v1200
    %v4943 = vpop.f32.mrf.mxu0
    %v4944 = vadd.f32 %v4931, %v4943
    %v4945 = vpop.f32.mrf.mxu0
    %4946 = vdwg.mxu0
    %4947 = vmatpush.bf16.msra.mxu0 %v3747
    %4948 = vmatpush.bf16.msra.mxu0 %v3746
    %4949 = vmatpush.bf16.msra.mxu0 %v3745
    %4950 = vmatpush.bf16.msra.mxu0 %v3744
    %4951 = vmatpush.bf16.msra.mxu0 %v3743
    %4952 = vmatpush.bf16.msra.mxu0 %v3742
    %4953 = vmatpush.bf16.msra.mxu0 %v3741
    %4954 = vmatpush.bf16.msra.mxu0 %v3740
    %4955 = vmatmul.bf16.gmra.mxu0 %v1201
    %v4956 = vpop.f32.mrf.mxu0
    %v4957 = vadd.f32 %v4944, %v4956
    %v4958 = vpop.f32.mrf.mxu0
    %4959 = vdwg.mxu0
    %4960 = vmatpush.bf16.msra.mxu0 %v3755
    %4961 = vmatpush.bf16.msra.mxu0 %v3754
    %4962 = vmatpush.bf16.msra.mxu0 %v3753
    %4963 = vmatpush.bf16.msra.mxu0 %v3752
    %4964 = vmatpush.bf16.msra.mxu0 %v3751
    %4965 = vmatpush.bf16.msra.mxu0 %v3750
    %4966 = vmatpush.bf16.msra.mxu0 %v3749
    %4967 = vmatpush.bf16.msra.mxu0 %v3748
    %4968 = vmatmul.bf16.gmra.mxu0 %v1202
    %v4969 = vpop.f32.mrf.mxu0
    %v4970 = vadd.f32 %v4957, %v4969
    %v4971 = vpop.f32.mrf.mxu0
    %4972 = vdwg.mxu0
    %4973 = vmatpush.bf16.msra.mxu0 %v3763
    %4974 = vmatpush.bf16.msra.mxu0 %v3762
    %4975 = vmatpush.bf16.msra.mxu0 %v3761
    %4976 = vmatpush.bf16.msra.mxu0 %v3760
    %4977 = vmatpush.bf16.msra.mxu0 %v3759
    %4978 = vmatpush.bf16.msra.mxu0 %v3758
    %4979 = vmatpush.bf16.msra.mxu0 %v3757
    %4980 = vmatpush.bf16.msra.mxu0 %v3756
    %4981 = vmatmul.bf16.gmra.mxu0 %v1203
    %v4982 = vpop.f32.mrf.mxu0
    %v4983 = vadd.f32 %v4970, %v4982
    %v4984 = vpop.f32.mrf.mxu0
    %4985 = vdwg.mxu0
    %4986 = vmatpush.bf16.msra.mxu0 %v3771
    %4987 = vmatpush.bf16.msra.mxu0 %v3770
    %4988 = vmatpush.bf16.msra.mxu0 %v3769
    %4989 = vmatpush.bf16.msra.mxu0 %v3768
    %4990 = vmatpush.bf16.msra.mxu0 %v3767
    %4991 = vmatpush.bf16.msra.mxu0 %v3766
    %4992 = vmatpush.bf16.msra.mxu0 %v3765
    %4993 = vmatpush.bf16.msra.mxu0 %v3764
    %4994 = vmatmul.bf16.gmra.mxu0 %v1204
    %v4995 = vpop.f32.mrf.mxu0
    %v4996 = vadd.f32 %v4983, %v4995
    %v4997 = vpop.f32.mrf.mxu0
    %4998 = vdwg.mxu0
    %4999 = vmatpush.bf16.msra.mxu0 %v3779
    %5000 = vmatpush.bf16.msra.mxu0 %v3778
    %5001 = vmatpush.bf16.msra.mxu0 %v3777
    %5002 = vmatpush.bf16.msra.mxu0 %v3776
    %5003 = vmatpush.bf16.msra.mxu0 %v3775
    %5004 = vmatpush.bf16.msra.mxu0 %v3774
    %5005 = vmatpush.bf16.msra.mxu0 %v3773
    %5006 = vmatpush.bf16.msra.mxu0 %v3772
    %5007 = vmatmul.bf16.gmra.mxu0 %v1205
    %v5008 = vpop.f32.mrf.mxu0
    %v5009 = vadd.f32 %v4996, %v5008
    %v5010 = vpop.f32.mrf.mxu0
    %5011 = vdwg.mxu0
    %5012 = vmatpush.bf16.msra.mxu0 %v3787
    %5013 = vmatpush.bf16.msra.mxu0 %v3786
    %5014 = vmatpush.bf16.msra.mxu0 %v3785
    %5015 = vmatpush.bf16.msra.mxu0 %v3784
    %5016 = vmatpush.bf16.msra.mxu0 %v3783
    %5017 = vmatpush.bf16.msra.mxu0 %v3782
    %5018 = vmatpush.bf16.msra.mxu0 %v3781
    %5019 = vmatpush.bf16.msra.mxu0 %v3780
    %5020 = vmatmul.bf16.gmra.mxu0 %v1208
    %v5021 = vpop.f32.mrf.mxu0
    %v5022 = vadd.f32 %v5009, %v5021
    %v5023 = vpop.f32.mrf.mxu0
    %5024 = vdwg.mxu0
    %5025 = vmatpush.bf16.msra.mxu0 %v3795
    %5026 = vmatpush.bf16.msra.mxu0 %v3794
    %5027 = vmatpush.bf16.msra.mxu0 %v3793
    %5028 = vmatpush.bf16.msra.mxu0 %v3792
    %5029 = vmatpush.bf16.msra.mxu0 %v3791
    %5030 = vmatpush.bf16.msra.mxu0 %v3790
    %5031 = vmatpush.bf16.msra.mxu0 %v3789
    %5032 = vmatpush.bf16.msra.mxu0 %v3788
    %5033 = vmatmul.bf16.gmra.mxu0 %v1209
    %v5034 = vpop.f32.mrf.mxu0
    %v5035 = vadd.f32 %v5022, %v5034
    %v5036 = vpop.f32.mrf.mxu0
    %5037 = vdwg.mxu0
    %5038 = vmatpush.bf16.msra.mxu0 %v3803
    %5039 = vmatpush.bf16.msra.mxu0 %v3802
    %5040 = vmatpush.bf16.msra.mxu0 %v3801
    %5041 = vmatpush.bf16.msra.mxu0 %v3800
    %5042 = vmatpush.bf16.msra.mxu0 %v3799
    %5043 = vmatpush.bf16.msra.mxu0 %v3798
    %5044 = vmatpush.bf16.msra.mxu0 %v3797
    %5045 = vmatpush.bf16.msra.mxu0 %v3796
    %5046 = vmatmul.bf16.gmra.mxu0 %v1210
    %v5047 = vpop.f32.mrf.mxu0
    %v5048 = vadd.f32 %v5035, %v5047
    %v5049 = vpop.f32.mrf.mxu0
    %5050 = vdwg.mxu0
    %5051 = vmatpush.bf16.msra.mxu0 %v3811
    %5052 = vmatpush.bf16.msra.mxu0 %v3810
    %5053 = vmatpush.bf16.msra.mxu0 %v3809
    %5054 = vmatpush.bf16.msra.mxu0 %v3808
    %5055 = vmatpush.bf16.msra.mxu0 %v3807
    %5056 = vmatpush.bf16.msra.mxu0 %v3806
    %5057 = vmatpush.bf16.msra.mxu0 %v3805
    %5058 = vmatpush.bf16.msra.mxu0 %v3804
    %5059 = vmatmul.bf16.gmra.mxu0 %v1211
    %v5060 = vpop.f32.mrf.mxu0
    %v5061 = vadd.f32 %v5048, %v5060
    %v5062 = vpop.f32.mrf.mxu0
    %5063 = vdwg.mxu0
    %5064 = vmatpush.bf16.msra.mxu0 %v3819
    %5065 = vmatpush.bf16.msra.mxu0 %v3818
    %5066 = vmatpush.bf16.msra.mxu0 %v3817
    %5067 = vmatpush.bf16.msra.mxu0 %v3816
    %5068 = vmatpush.bf16.msra.mxu0 %v3815
    %5069 = vmatpush.bf16.msra.mxu0 %v3814
    %5070 = vmatpush.bf16.msra.mxu0 %v3813
    %5071 = vmatpush.bf16.msra.mxu0 %v3812
    %5072 = vmatmul.bf16.gmra.mxu0 %v1212
    %v5073 = vpop.f32.mrf.mxu0
    %v5074 = vadd.f32 %v5061, %v5073
    %v5075 = vpop.f32.mrf.mxu0
    %5076 = vdwg.mxu0
    %5077 = vmatpush.bf16.msra.mxu0 %v3827
    %5078 = vmatpush.bf16.msra.mxu0 %v3826
    %5079 = vmatpush.bf16.msra.mxu0 %v3825
    %5080 = vmatpush.bf16.msra.mxu0 %v3824
    %5081 = vmatpush.bf16.msra.mxu0 %v3823
    %5082 = vmatpush.bf16.msra.mxu0 %v3822
    %5083 = vmatpush.bf16.msra.mxu0 %v3821
    %5084 = vmatpush.bf16.msra.mxu0 %v3820
    %5085 = vmatmul.bf16.gmra.mxu0 %v1213
    %v5086 = vpop.f32.mrf.mxu0
    %v5087 = vadd.f32 %v5074, %v5086
    %v5088 = vpop.f32.mrf.mxu0
    %5089 = vdwg.mxu0
    %5090 = vmatpush.bf16.msra.mxu0 %v3835
    %5091 = vmatpush.bf16.msra.mxu0 %v3834
    %5092 = vmatpush.bf16.msra.mxu0 %v3833
    %5093 = vmatpush.bf16.msra.mxu0 %v3832
    %5094 = vmatpush.bf16.msra.mxu0 %v3831
    %5095 = vmatpush.bf16.msra.mxu0 %v3830
    %5096 = vmatpush.bf16.msra.mxu0 %v3829
    %5097 = vmatpush.bf16.msra.mxu0 %v3828
    %5098 = vmatmul.bf16.gmra.mxu0 %v1214
    %v5099 = vpop.f32.mrf.mxu0
    %v5100 = vadd.f32 %v5087, %v5099
    %v5101 = vpop.f32.mrf.mxu0
    %5102 = vdwg.mxu0
    %5103 = vmatpush.bf16.msra.mxu0 %v3843
    %5104 = vmatpush.bf16.msra.mxu0 %v3842
    %5105 = vmatpush.bf16.msra.mxu0 %v3841
    %5106 = vmatpush.bf16.msra.mxu0 %v3840
    %5107 = vmatpush.bf16.msra.mxu0 %v3839
    %5108 = vmatpush.bf16.msra.mxu0 %v3838
    %5109 = vmatpush.bf16.msra.mxu0 %v3837
    %5110 = vmatpush.bf16.msra.mxu0 %v3836
    %5111 = vmatmul.bf16.gmra.mxu0 %v1215
    %v5112 = vpop.f32.mrf.mxu0
    %v5113 = vadd.f32 %v5100, %v5112
    %v5114 = vpop.f32.mrf.mxu0
    %5115 = vdwg.mxu0
    %5116 = vmatpush.bf16.msra.mxu0 %v3851
    %5117 = vmatpush.bf16.msra.mxu0 %v3850
    %5118 = vmatpush.bf16.msra.mxu0 %v3849
    %5119 = vmatpush.bf16.msra.mxu0 %v3848
    %5120 = vmatpush.bf16.msra.mxu0 %v3847
    %5121 = vmatpush.bf16.msra.mxu0 %v3846
    %5122 = vmatpush.bf16.msra.mxu0 %v3845
    %5123 = vmatpush.bf16.msra.mxu0 %v3844
    %5124 = vmatmul.bf16.gmra.mxu0 %v1218
    %v5125 = vpop.f32.mrf.mxu0
    %v5126 = vadd.f32 %v5113, %v5125
    %v5127 = vpop.f32.mrf.mxu0
    %5128 = vdwg.mxu0
    %5129 = vmatpush.bf16.msra.mxu0 %v3859
    %5130 = vmatpush.bf16.msra.mxu0 %v3858
    %5131 = vmatpush.bf16.msra.mxu0 %v3857
    %5132 = vmatpush.bf16.msra.mxu0 %v3856
    %5133 = vmatpush.bf16.msra.mxu0 %v3855
    %5134 = vmatpush.bf16.msra.mxu0 %v3854
    %5135 = vmatpush.bf16.msra.mxu0 %v3853
    %5136 = vmatpush.bf16.msra.mxu0 %v3852
    %5137 = vmatmul.bf16.gmra.mxu0 %v1219
    %v5138 = vpop.f32.mrf.mxu0
    %v5139 = vadd.f32 %v5126, %v5138
    %v5140 = vpop.f32.mrf.mxu0
    %5141 = vdwg.mxu0
    %5142 = vmatpush.bf16.msra.mxu0 %v3867
    %5143 = vmatpush.bf16.msra.mxu0 %v3866
    %5144 = vmatpush.bf16.msra.mxu0 %v3865
    %5145 = vmatpush.bf16.msra.mxu0 %v3864
    %5146 = vmatpush.bf16.msra.mxu0 %v3863
    %5147 = vmatpush.bf16.msra.mxu0 %v3862
    %5148 = vmatpush.bf16.msra.mxu0 %v3861
    %5149 = vmatpush.bf16.msra.mxu0 %v3860
    %5150 = vmatmul.bf16.gmra.mxu0 %v1220
    %v5151 = vpop.f32.mrf.mxu0
    %v5152 = vadd.f32 %v5139, %v5151
    %v5153 = vpop.f32.mrf.mxu0
    %5154 = vdwg.mxu0
    %5155 = vmatpush.bf16.msra.mxu0 %v3875
    %5156 = vmatpush.bf16.msra.mxu0 %v3874
    %5157 = vmatpush.bf16.msra.mxu0 %v3873
    %5158 = vmatpush.bf16.msra.mxu0 %v3872
    %5159 = vmatpush.bf16.msra.mxu0 %v3871
    %5160 = vmatpush.bf16.msra.mxu0 %v3870
    %5161 = vmatpush.bf16.msra.mxu0 %v3869
    %5162 = vmatpush.bf16.msra.mxu0 %v3868
    %5163 = vmatmul.bf16.gmra.mxu0 %v1221
    %v5164 = vpop.f32.mrf.mxu0
    %v5165 = vadd.f32 %v5152, %v5164
    %v5166 = vpop.f32.mrf.mxu0
    %5167 = vdwg.mxu0
    %5168 = vmatpush.bf16.msra.mxu0 %v3883
    %5169 = vmatpush.bf16.msra.mxu0 %v3882
    %5170 = vmatpush.bf16.msra.mxu0 %v3881
    %5171 = vmatpush.bf16.msra.mxu0 %v3880
    %5172 = vmatpush.bf16.msra.mxu0 %v3879
    %5173 = vmatpush.bf16.msra.mxu0 %v3878
    %5174 = vmatpush.bf16.msra.mxu0 %v3877
    %5175 = vmatpush.bf16.msra.mxu0 %v3876
    %5176 = vmatmul.bf16.gmra.mxu0 %v1222
    %v5177 = vpop.f32.mrf.mxu0
    %v5178 = vadd.f32 %v5165, %v5177
    %v5179 = vpop.f32.mrf.mxu0
    %5180 = vdwg.mxu0
    %5181 = vmatpush.bf16.msra.mxu0 %v3891
    %5182 = vmatpush.bf16.msra.mxu0 %v3890
    %5183 = vmatpush.bf16.msra.mxu0 %v3889
    %5184 = vmatpush.bf16.msra.mxu0 %v3888
    %5185 = vmatpush.bf16.msra.mxu0 %v3887
    %5186 = vmatpush.bf16.msra.mxu0 %v3886
    %5187 = vmatpush.bf16.msra.mxu0 %v3885
    %5188 = vmatpush.bf16.msra.mxu0 %v3884
    %5189 = vmatmul.bf16.gmra.mxu0 %v1223
    %v5190 = vpop.f32.mrf.mxu0
    %v5191 = vadd.f32 %v5178, %v5190
    %v5192 = vpop.f32.mrf.mxu0
    %5193 = vdwg.mxu0
    %5194 = vmatpush.bf16.msra.mxu0 %v3899
    %5195 = vmatpush.bf16.msra.mxu0 %v3898
    %5196 = vmatpush.bf16.msra.mxu0 %v3897
    %5197 = vmatpush.bf16.msra.mxu0 %v3896
    %5198 = vmatpush.bf16.msra.mxu0 %v3895
    %5199 = vmatpush.bf16.msra.mxu0 %v3894
    %5200 = vmatpush.bf16.msra.mxu0 %v3893
    %5201 = vmatpush.bf16.msra.mxu0 %v3892
    %5202 = vmatmul.bf16.gmra.mxu0 %v1224
    %v5203 = vpop.f32.mrf.mxu0
    %v5204 = vadd.f32 %v5191, %v5203
    %v5205 = vpop.f32.mrf.mxu0
    %5206 = vdwg.mxu0
    %5207 = vmatpush.bf16.msra.mxu0 %v3907
    %5208 = vmatpush.bf16.msra.mxu0 %v3906
    %5209 = vmatpush.bf16.msra.mxu0 %v3905
    %5210 = vmatpush.bf16.msra.mxu0 %v3904
    %5211 = vmatpush.bf16.msra.mxu0 %v3903
    %5212 = vmatpush.bf16.msra.mxu0 %v3902
    %5213 = vmatpush.bf16.msra.mxu0 %v3901
    %5214 = vmatpush.bf16.msra.mxu0 %v3900
    %5215 = vmatmul.bf16.gmra.mxu0 %v1225
    %v5216 = vpop.f32.mrf.mxu0
    %v5217 = vadd.f32 %v5204, %v5216
    %v5218 = vpop.f32.mrf.mxu0
    %5219 = vdwg.mxu0
    %5220 = vmatpush.bf16.msra.mxu0 %v3915
    %5221 = vmatpush.bf16.msra.mxu0 %v3914
    %5222 = vmatpush.bf16.msra.mxu0 %v3913
    %5223 = vmatpush.bf16.msra.mxu0 %v3912
    %5224 = vmatpush.bf16.msra.mxu0 %v3911
    %5225 = vmatpush.bf16.msra.mxu0 %v3910
    %5226 = vmatpush.bf16.msra.mxu0 %v3909
    %5227 = vmatpush.bf16.msra.mxu0 %v3908
    %5228 = vmatmul.bf16.gmra.mxu0 %v1228
    %v5229 = vpop.f32.mrf.mxu0
    %v5230 = vadd.f32 %v5217, %v5229
    %v5231 = vpop.f32.mrf.mxu0
    %5232 = vdwg.mxu0
    %5233 = vmatpush.bf16.msra.mxu0 %v3923
    %5234 = vmatpush.bf16.msra.mxu0 %v3922
    %5235 = vmatpush.bf16.msra.mxu0 %v3921
    %5236 = vmatpush.bf16.msra.mxu0 %v3920
    %5237 = vmatpush.bf16.msra.mxu0 %v3919
    %5238 = vmatpush.bf16.msra.mxu0 %v3918
    %5239 = vmatpush.bf16.msra.mxu0 %v3917
    %5240 = vmatpush.bf16.msra.mxu0 %v3916
    %5241 = vmatmul.bf16.gmra.mxu0 %v1229
    %v5242 = vpop.f32.mrf.mxu0
    %v5243 = vadd.f32 %v5230, %v5242
    %v5244 = vpop.f32.mrf.mxu0
    %5245 = vdwg.mxu0
    %5246 = vmatpush.bf16.msra.mxu0 %v3931
    %5247 = vmatpush.bf16.msra.mxu0 %v3930
    %5248 = vmatpush.bf16.msra.mxu0 %v3929
    %5249 = vmatpush.bf16.msra.mxu0 %v3928
    %5250 = vmatpush.bf16.msra.mxu0 %v3927
    %5251 = vmatpush.bf16.msra.mxu0 %v3926
    %5252 = vmatpush.bf16.msra.mxu0 %v3925
    %5253 = vmatpush.bf16.msra.mxu0 %v3924
    %5254 = vmatmul.bf16.gmra.mxu0 %v1230
    %v5255 = vpop.f32.mrf.mxu0
    %v5256 = vadd.f32 %v5243, %v5255
    %v5257 = vpop.f32.mrf.mxu0
    %5258 = vdwg.mxu0
    %5259 = vmatpush.bf16.msra.mxu0 %v3939
    %5260 = vmatpush.bf16.msra.mxu0 %v3938
    %5261 = vmatpush.bf16.msra.mxu0 %v3937
    %5262 = vmatpush.bf16.msra.mxu0 %v3936
    %5263 = vmatpush.bf16.msra.mxu0 %v3935
    %5264 = vmatpush.bf16.msra.mxu0 %v3934
    %5265 = vmatpush.bf16.msra.mxu0 %v3933
    %5266 = vmatpush.bf16.msra.mxu0 %v3932
    %5267 = vmatmul.bf16.gmra.mxu0 %v1231
    %v5268 = vpop.f32.mrf.mxu0
    %v5269 = vadd.f32 %v5256, %v5268
    %v5270 = vpop.f32.mrf.mxu0
    %5271 = vdwg.mxu0
    %5272 = vmatpush.bf16.msra.mxu0 %v3947
    %5273 = vmatpush.bf16.msra.mxu0 %v3946
    %5274 = vmatpush.bf16.msra.mxu0 %v3945
    %5275 = vmatpush.bf16.msra.mxu0 %v3944
    %5276 = vmatpush.bf16.msra.mxu0 %v3943
    %5277 = vmatpush.bf16.msra.mxu0 %v3942
    %5278 = vmatpush.bf16.msra.mxu0 %v3941
    %5279 = vmatpush.bf16.msra.mxu0 %v3940
    %5280 = vmatmul.bf16.gmra.mxu0 %v1232
    %v5281 = vpop.f32.mrf.mxu0
    %v5282 = vadd.f32 %v5269, %v5281
    %v5283 = vpop.f32.mrf.mxu0
    %5284 = vdwg.mxu0
    %5285 = vmatpush.bf16.msra.mxu0 %v3955
    %5286 = vmatpush.bf16.msra.mxu0 %v3954
    %5287 = vmatpush.bf16.msra.mxu0 %v3953
    %5288 = vmatpush.bf16.msra.mxu0 %v3952
    %5289 = vmatpush.bf16.msra.mxu0 %v3951
    %5290 = vmatpush.bf16.msra.mxu0 %v3950
    %5291 = vmatpush.bf16.msra.mxu0 %v3949
    %5292 = vmatpush.bf16.msra.mxu0 %v3948
    %5293 = vmatmul.bf16.gmra.mxu0 %v1233
    %v5294 = vpop.f32.mrf.mxu0
    %v5295 = vadd.f32 %v5282, %v5294
    %v5296 = vpop.f32.mrf.mxu0
    %5297 = vdwg.mxu0
    %5298 = vmatpush.bf16.msra.mxu0 %v3963
    %5299 = vmatpush.bf16.msra.mxu0 %v3962
    %5300 = vmatpush.bf16.msra.mxu0 %v3961
    %5301 = vmatpush.bf16.msra.mxu0 %v3960
    %5302 = vmatpush.bf16.msra.mxu0 %v3959
    %5303 = vmatpush.bf16.msra.mxu0 %v3958
    %5304 = vmatpush.bf16.msra.mxu0 %v3957
    %5305 = vmatpush.bf16.msra.mxu0 %v3956
    %5306 = vmatmul.bf16.gmra.mxu0 %v1234
    %v5307 = vpop.f32.mrf.mxu0
    %v5308 = vadd.f32 %v5295, %v5307
    %v5309 = vpop.f32.mrf.mxu0
    %5310 = vdwg.mxu0
    %5311 = vmatpush.bf16.msra.mxu0 %v3971
    %5312 = vmatpush.bf16.msra.mxu0 %v3970
    %5313 = vmatpush.bf16.msra.mxu0 %v3969
    %5314 = vmatpush.bf16.msra.mxu0 %v3968
    %5315 = vmatpush.bf16.msra.mxu0 %v3967
    %5316 = vmatpush.bf16.msra.mxu0 %v3966
    %5317 = vmatpush.bf16.msra.mxu0 %v3965
    %5318 = vmatpush.bf16.msra.mxu0 %v3964
    %5319 = vmatmul.bf16.gmra.mxu0 %v1235
    %v5320 = vpop.f32.mrf.mxu0
    %v5321 = vadd.f32 %v5308, %v5320
    %v5322 = vpop.f32.mrf.mxu0
    %5323 = vdwg.mxu0
    %5324 = vmatpush.bf16.msra.mxu0 %v3979
    %5325 = vmatpush.bf16.msra.mxu0 %v3978
    %5326 = vmatpush.bf16.msra.mxu0 %v3977
    %5327 = vmatpush.bf16.msra.mxu0 %v3976
    %5328 = vmatpush.bf16.msra.mxu0 %v3975
    %5329 = vmatpush.bf16.msra.mxu0 %v3974
    %5330 = vmatpush.bf16.msra.mxu0 %v3973
    %5331 = vmatpush.bf16.msra.mxu0 %v3972
    %5332 = vmatmul.bf16.gmra.mxu0 %v1238
    %v5333 = vpop.f32.mrf.mxu0
    %v5334 = vadd.f32 %v5321, %v5333
    %v5335 = vpop.f32.mrf.mxu0
    %5336 = vdwg.mxu0
    %5337 = vmatpush.bf16.msra.mxu0 %v3987
    %5338 = vmatpush.bf16.msra.mxu0 %v3986
    %5339 = vmatpush.bf16.msra.mxu0 %v3985
    %5340 = vmatpush.bf16.msra.mxu0 %v3984
    %5341 = vmatpush.bf16.msra.mxu0 %v3983
    %5342 = vmatpush.bf16.msra.mxu0 %v3982
    %5343 = vmatpush.bf16.msra.mxu0 %v3981
    %5344 = vmatpush.bf16.msra.mxu0 %v3980
    %5345 = vmatmul.bf16.gmra.mxu0 %v1239
    %v5346 = vpop.f32.mrf.mxu0
    %v5347 = vadd.f32 %v5334, %v5346
    %v5348 = vpop.f32.mrf.mxu0
    %5349 = vdwg.mxu0
    %5350 = vmatpush.bf16.msra.mxu0 %v3995
    %5351 = vmatpush.bf16.msra.mxu0 %v3994
    %5352 = vmatpush.bf16.msra.mxu0 %v3993
    %5353 = vmatpush.bf16.msra.mxu0 %v3992
    %5354 = vmatpush.bf16.msra.mxu0 %v3991
    %5355 = vmatpush.bf16.msra.mxu0 %v3990
    %5356 = vmatpush.bf16.msra.mxu0 %v3989
    %5357 = vmatpush.bf16.msra.mxu0 %v3988
    %5358 = vmatmul.bf16.gmra.mxu0 %v1240
    %v5359 = vpop.f32.mrf.mxu0
    %v5360 = vadd.f32 %v5347, %v5359
    %v5361 = vpop.f32.mrf.mxu0
    %5362 = vdwg.mxu0
    %5363 = vmatpush.bf16.msra.mxu0 %v4003
    %5364 = vmatpush.bf16.msra.mxu0 %v4002
    %5365 = vmatpush.bf16.msra.mxu0 %v4001
    %5366 = vmatpush.bf16.msra.mxu0 %v4000
    %5367 = vmatpush.bf16.msra.mxu0 %v3999
    %5368 = vmatpush.bf16.msra.mxu0 %v3998
    %5369 = vmatpush.bf16.msra.mxu0 %v3997
    %5370 = vmatpush.bf16.msra.mxu0 %v3996
    %5371 = vmatmul.bf16.gmra.mxu0 %v1241
    %v5372 = vpop.f32.mrf.mxu0
    %v5373 = vadd.f32 %v5360, %v5372
    %v5374 = vpop.f32.mrf.mxu0
    %5375 = vdwg.mxu0
    %5376 = vmatpush.bf16.msra.mxu0 %v4011
    %5377 = vmatpush.bf16.msra.mxu0 %v4010
    %5378 = vmatpush.bf16.msra.mxu0 %v4009
    %5379 = vmatpush.bf16.msra.mxu0 %v4008
    %5380 = vmatpush.bf16.msra.mxu0 %v4007
    %5381 = vmatpush.bf16.msra.mxu0 %v4006
    %5382 = vmatpush.bf16.msra.mxu0 %v4005
    %5383 = vmatpush.bf16.msra.mxu0 %v4004
    %5384 = vmatmul.bf16.gmra.mxu0 %v1242
    %v5385 = vpop.f32.mrf.mxu0
    %v5386 = vadd.f32 %v5373, %v5385
    %v5387 = vpop.f32.mrf.mxu0
    %5388 = vdwg.mxu0
    %5389 = vmatpush.bf16.msra.mxu0 %v4019
    %5390 = vmatpush.bf16.msra.mxu0 %v4018
    %5391 = vmatpush.bf16.msra.mxu0 %v4017
    %5392 = vmatpush.bf16.msra.mxu0 %v4016
    %5393 = vmatpush.bf16.msra.mxu0 %v4015
    %5394 = vmatpush.bf16.msra.mxu0 %v4014
    %5395 = vmatpush.bf16.msra.mxu0 %v4013
    %5396 = vmatpush.bf16.msra.mxu0 %v4012
    %5397 = vmatmul.bf16.gmra.mxu0 %v1243
    %v5398 = vpop.f32.mrf.mxu0
    %v5399 = vadd.f32 %v5386, %v5398
    %v5400 = vpop.f32.mrf.mxu0
    %5401 = vdwg.mxu0
    %5402 = vmatpush.bf16.msra.mxu0 %v4027
    %5403 = vmatpush.bf16.msra.mxu0 %v4026
    %5404 = vmatpush.bf16.msra.mxu0 %v4025
    %5405 = vmatpush.bf16.msra.mxu0 %v4024
    %5406 = vmatpush.bf16.msra.mxu0 %v4023
    %5407 = vmatpush.bf16.msra.mxu0 %v4022
    %5408 = vmatpush.bf16.msra.mxu0 %v4021
    %5409 = vmatpush.bf16.msra.mxu0 %v4020
    %5410 = vmatmul.bf16.gmra.mxu0 %v1244
    %v5411 = vpop.f32.mrf.mxu0
    %v5412 = vadd.f32 %v5399, %v5411
    %v5413 = vpop.f32.mrf.mxu0
    %5414 = vdwg.mxu0
    %5415 = vmatpush.bf16.msra.mxu0 %v4035
    %5416 = vmatpush.bf16.msra.mxu0 %v4034
    %5417 = vmatpush.bf16.msra.mxu0 %v4033
    %5418 = vmatpush.bf16.msra.mxu0 %v4032
    %5419 = vmatpush.bf16.msra.mxu0 %v4031
    %5420 = vmatpush.bf16.msra.mxu0 %v4030
    %5421 = vmatpush.bf16.msra.mxu0 %v4029
    %5422 = vmatpush.bf16.msra.mxu0 %v4028
    %5423 = vmatmul.bf16.gmra.mxu0 %v1245
    %v5424 = vpop.f32.mrf.mxu0
    %v5425 = vadd.f32 %v5412, %v5424
    %v5426 = vpop.f32.mrf.mxu0
    %5427 = vdwg.mxu0
    %5428 = vmatpush.bf16.msra.mxu0 %v4043
    %5429 = vmatpush.bf16.msra.mxu0 %v4042
    %5430 = vmatpush.bf16.msra.mxu0 %v4041
    %5431 = vmatpush.bf16.msra.mxu0 %v4040
    %5432 = vmatpush.bf16.msra.mxu0 %v4039
    %5433 = vmatpush.bf16.msra.mxu0 %v4038
    %5434 = vmatpush.bf16.msra.mxu0 %v4037
    %5435 = vmatpush.bf16.msra.mxu0 %v4036
    %5436 = vmatmul.bf16.gmra.mxu0 %v1248
    %v5437 = vpop.f32.mrf.mxu0
    %v5438 = vadd.f32 %v5425, %v5437
    %v5439 = vpop.f32.mrf.mxu0
    %5440 = vdwg.mxu0
    %5441 = vmatpush.bf16.msra.mxu0 %v4051
    %5442 = vmatpush.bf16.msra.mxu0 %v4050
    %5443 = vmatpush.bf16.msra.mxu0 %v4049
    %5444 = vmatpush.bf16.msra.mxu0 %v4048
    %5445 = vmatpush.bf16.msra.mxu0 %v4047
    %5446 = vmatpush.bf16.msra.mxu0 %v4046
    %5447 = vmatpush.bf16.msra.mxu0 %v4045
    %5448 = vmatpush.bf16.msra.mxu0 %v4044
    %5449 = vmatmul.bf16.gmra.mxu0 %v1249
    %v5450 = vpop.f32.mrf.mxu0
    %v5451 = vadd.f32 %v5438, %v5450
    %v5452 = vpop.f32.mrf.mxu0
    %5453 = vdwg.mxu0
    %5454 = vmatpush.bf16.msra.mxu0 %v4059
    %5455 = vmatpush.bf16.msra.mxu0 %v4058
    %5456 = vmatpush.bf16.msra.mxu0 %v4057
    %5457 = vmatpush.bf16.msra.mxu0 %v4056
    %5458 = vmatpush.bf16.msra.mxu0 %v4055
    %5459 = vmatpush.bf16.msra.mxu0 %v4054
    %5460 = vmatpush.bf16.msra.mxu0 %v4053
    %5461 = vmatpush.bf16.msra.mxu0 %v4052
    %5462 = vmatmul.bf16.gmra.mxu0 %v1250
    %v5463 = vpop.f32.mrf.mxu0
    %v5464 = vadd.f32 %v5451, %v5463
    %v5465 = vpop.f32.mrf.mxu0
    %5466 = vdwg.mxu0
    %5467 = vmatpush.bf16.msra.mxu0 %v4067
    %5468 = vmatpush.bf16.msra.mxu0 %v4066
    %5469 = vmatpush.bf16.msra.mxu0 %v4065
    %5470 = vmatpush.bf16.msra.mxu0 %v4064
    %5471 = vmatpush.bf16.msra.mxu0 %v4063
    %5472 = vmatpush.bf16.msra.mxu0 %v4062
    %5473 = vmatpush.bf16.msra.mxu0 %v4061
    %5474 = vmatpush.bf16.msra.mxu0 %v4060
    %5475 = vmatmul.bf16.gmra.mxu0 %v1251
    %v5476 = vpop.f32.mrf.mxu0
    %v5477 = vadd.f32 %v5464, %v5476
    %v5478 = vpop.f32.mrf.mxu0
    %5479 = vdwg.mxu0
    %5480 = vmatpush.bf16.msra.mxu0 %v4075
    %5481 = vmatpush.bf16.msra.mxu0 %v4074
    %5482 = vmatpush.bf16.msra.mxu0 %v4073
    %5483 = vmatpush.bf16.msra.mxu0 %v4072
    %5484 = vmatpush.bf16.msra.mxu0 %v4071
    %5485 = vmatpush.bf16.msra.mxu0 %v4070
    %5486 = vmatpush.bf16.msra.mxu0 %v4069
    %5487 = vmatpush.bf16.msra.mxu0 %v4068
    %5488 = vmatmul.bf16.gmra.mxu0 %v1252
    %v5489 = vpop.f32.mrf.mxu0
    %v5490 = vadd.f32 %v5477, %v5489
    %v5491 = vpop.f32.mrf.mxu0
    %5492 = vdwg.mxu0
    %5493 = vmatpush.bf16.msra.mxu0 %v4083
    %5494 = vmatpush.bf16.msra.mxu0 %v4082
    %5495 = vmatpush.bf16.msra.mxu0 %v4081
    %5496 = vmatpush.bf16.msra.mxu0 %v4080
    %5497 = vmatpush.bf16.msra.mxu0 %v4079
    %5498 = vmatpush.bf16.msra.mxu0 %v4078
    %5499 = vmatpush.bf16.msra.mxu0 %v4077
    %5500 = vmatpush.bf16.msra.mxu0 %v4076
    %5501 = vmatmul.bf16.gmra.mxu0 %v1253
    %v5502 = vpop.f32.mrf.mxu0
    %v5503 = vadd.f32 %v5490, %v5502
    %v5504 = vpop.f32.mrf.mxu0
    %5505 = vdwg.mxu0
    %5506 = vmatpush.bf16.msra.mxu0 %v4091
    %5507 = vmatpush.bf16.msra.mxu0 %v4090
    %5508 = vmatpush.bf16.msra.mxu0 %v4089
    %5509 = vmatpush.bf16.msra.mxu0 %v4088
    %5510 = vmatpush.bf16.msra.mxu0 %v4087
    %5511 = vmatpush.bf16.msra.mxu0 %v4086
    %5512 = vmatpush.bf16.msra.mxu0 %v4085
    %5513 = vmatpush.bf16.msra.mxu0 %v4084
    %5514 = vmatmul.bf16.gmra.mxu0 %v1254
    %v5515 = vpop.f32.mrf.mxu0
    %v5516 = vadd.f32 %v5503, %v5515
    %v5517 = vpop.f32.mrf.mxu0
    %5518 = vdwg.mxu0
    %5519 = vmatpush.bf16.msra.mxu0 %v4099
    %5520 = vmatpush.bf16.msra.mxu0 %v4098
    %5521 = vmatpush.bf16.msra.mxu0 %v4097
    %5522 = vmatpush.bf16.msra.mxu0 %v4096
    %5523 = vmatpush.bf16.msra.mxu0 %v4095
    %5524 = vmatpush.bf16.msra.mxu0 %v4094
    %5525 = vmatpush.bf16.msra.mxu0 %v4093
    %5526 = vmatpush.bf16.msra.mxu0 %v4092
    %5527 = vmatmul.bf16.gmra.mxu0 %v1255
    %v5528 = vpop.f32.mrf.mxu0
    %v5529 = vadd.f32 %v5516, %v5528
    %v5530 = vpop.f32.mrf.mxu0
    %5531 = vdwg.mxu0
    %5532 = vmatpush.bf16.msra.mxu0 %v4107
    %5533 = vmatpush.bf16.msra.mxu0 %v4106
    %5534 = vmatpush.bf16.msra.mxu0 %v4105
    %5535 = vmatpush.bf16.msra.mxu0 %v4104
    %5536 = vmatpush.bf16.msra.mxu0 %v4103
    %5537 = vmatpush.bf16.msra.mxu0 %v4102
    %5538 = vmatpush.bf16.msra.mxu0 %v4101
    %5539 = vmatpush.bf16.msra.mxu0 %v4100
    %5540 = vmatmul.bf16.gmra.mxu0 %v1258
    %v5541 = vpop.f32.mrf.mxu0
    %v5542 = vadd.f32 %v5529, %v5541
    %v5543 = vpop.f32.mrf.mxu0
    %5544 = vdwg.mxu0
    %5545 = vmatpush.bf16.msra.mxu0 %v4115
    %5546 = vmatpush.bf16.msra.mxu0 %v4114
    %5547 = vmatpush.bf16.msra.mxu0 %v4113
    %5548 = vmatpush.bf16.msra.mxu0 %v4112
    %5549 = vmatpush.bf16.msra.mxu0 %v4111
    %5550 = vmatpush.bf16.msra.mxu0 %v4110
    %5551 = vmatpush.bf16.msra.mxu0 %v4109
    %5552 = vmatpush.bf16.msra.mxu0 %v4108
    %5553 = vmatmul.bf16.gmra.mxu0 %v1259
    %v5554 = vpop.f32.mrf.mxu0
    %v5555 = vadd.f32 %v5542, %v5554
    %v5556 = vpop.f32.mrf.mxu0
    %5557 = vdwg.mxu0
    %5558 = vmatpush.bf16.msra.mxu0 %v4123
    %5559 = vmatpush.bf16.msra.mxu0 %v4122
    %5560 = vmatpush.bf16.msra.mxu0 %v4121
    %5561 = vmatpush.bf16.msra.mxu0 %v4120
    %5562 = vmatpush.bf16.msra.mxu0 %v4119
    %5563 = vmatpush.bf16.msra.mxu0 %v4118
    %5564 = vmatpush.bf16.msra.mxu0 %v4117
    %5565 = vmatpush.bf16.msra.mxu0 %v4116
    %5566 = vmatmul.bf16.gmra.mxu0 %v1260
    %v5567 = vpop.f32.mrf.mxu0
    %v5568 = vadd.f32 %v5555, %v5567
    %v5569 = vpop.f32.mrf.mxu0
    %5570 = vdwg.mxu0
    %5571 = vmatpush.bf16.msra.mxu0 %v4131
    %5572 = vmatpush.bf16.msra.mxu0 %v4130
    %5573 = vmatpush.bf16.msra.mxu0 %v4129
    %5574 = vmatpush.bf16.msra.mxu0 %v4128
    %5575 = vmatpush.bf16.msra.mxu0 %v4127
    %5576 = vmatpush.bf16.msra.mxu0 %v4126
    %5577 = vmatpush.bf16.msra.mxu0 %v4125
    %5578 = vmatpush.bf16.msra.mxu0 %v4124
    %5579 = vmatmul.bf16.gmra.mxu0 %v1261
    %v5580 = vpop.f32.mrf.mxu0
    %v5581 = vadd.f32 %v5568, %v5580
    %v5582 = vpop.f32.mrf.mxu0
    %5583 = vdwg.mxu0
    %5584 = vmatpush.bf16.msra.mxu0 %v4139
    %5585 = vmatpush.bf16.msra.mxu0 %v4138
    %5586 = vmatpush.bf16.msra.mxu0 %v4137
    %5587 = vmatpush.bf16.msra.mxu0 %v4136
    %5588 = vmatpush.bf16.msra.mxu0 %v4135
    %5589 = vmatpush.bf16.msra.mxu0 %v4134
    %5590 = vmatpush.bf16.msra.mxu0 %v4133
    %5591 = vmatpush.bf16.msra.mxu0 %v4132
    %5592 = vmatmul.bf16.gmra.mxu0 %v1262
    %v5593 = vpop.f32.mrf.mxu0
    %v5594 = vadd.f32 %v5581, %v5593
    %v5595 = vpop.f32.mrf.mxu0
    %5596 = vdwg.mxu0
    %5597 = vmatpush.bf16.msra.mxu0 %v4147
    %5598 = vmatpush.bf16.msra.mxu0 %v4146
    %5599 = vmatpush.bf16.msra.mxu0 %v4145
    %5600 = vmatpush.bf16.msra.mxu0 %v4144
    %5601 = vmatpush.bf16.msra.mxu0 %v4143
    %5602 = vmatpush.bf16.msra.mxu0 %v4142
    %5603 = vmatpush.bf16.msra.mxu0 %v4141
    %5604 = vmatpush.bf16.msra.mxu0 %v4140
    %5605 = vmatmul.bf16.gmra.mxu0 %v1263
    %v5606 = vpop.f32.mrf.mxu0
    %v5607 = vadd.f32 %v5594, %v5606
    %v5608 = vpop.f32.mrf.mxu0
    %5609 = vdwg.mxu0
    %5610 = vmatpush.bf16.msra.mxu0 %v4155
    %5611 = vmatpush.bf16.msra.mxu0 %v4154
    %5612 = vmatpush.bf16.msra.mxu0 %v4153
    %5613 = vmatpush.bf16.msra.mxu0 %v4152
    %5614 = vmatpush.bf16.msra.mxu0 %v4151
    %5615 = vmatpush.bf16.msra.mxu0 %v4150
    %5616 = vmatpush.bf16.msra.mxu0 %v4149
    %5617 = vmatpush.bf16.msra.mxu0 %v4148
    %5618 = vmatmul.bf16.gmra.mxu0 %v1264
    %v5619 = vpop.f32.mrf.mxu0
    %v5620 = vadd.f32 %v5607, %v5619
    %v5621 = vpop.f32.mrf.mxu0
    %5622 = vdwg.mxu0
    %5623 = vmatpush.bf16.msra.mxu0 %v4163
    %5624 = vmatpush.bf16.msra.mxu0 %v4162
    %5625 = vmatpush.bf16.msra.mxu0 %v4161
    %5626 = vmatpush.bf16.msra.mxu0 %v4160
    %5627 = vmatpush.bf16.msra.mxu0 %v4159
    %5628 = vmatpush.bf16.msra.mxu0 %v4158
    %5629 = vmatpush.bf16.msra.mxu0 %v4157
    %5630 = vmatpush.bf16.msra.mxu0 %v4156
    %5631 = vmatmul.bf16.gmra.mxu0 %v1265
    %v5632 = vpop.f32.mrf.mxu0
    %v5633 = vadd.f32 %v5620, %v5632
    %v5634 = vpop.f32.mrf.mxu0
    %5635 = vdwg.mxu0
    %5636 = vmatpush.bf16.msra.mxu0 %v4171
    %5637 = vmatpush.bf16.msra.mxu0 %v4170
    %5638 = vmatpush.bf16.msra.mxu0 %v4169
    %5639 = vmatpush.bf16.msra.mxu0 %v4168
    %5640 = vmatpush.bf16.msra.mxu0 %v4167
    %5641 = vmatpush.bf16.msra.mxu0 %v4166
    %5642 = vmatpush.bf16.msra.mxu0 %v4165
    %5643 = vmatpush.bf16.msra.mxu0 %v4164
    %5644 = vmatmul.bf16.gmra.mxu0 %v1268
    %v5645 = vpop.f32.mrf.mxu0
    %v5646 = vadd.f32 %v5633, %v5645
    %v5647 = vpop.f32.mrf.mxu0
    %5648 = vdwg.mxu0
    %5649 = vmatpush.bf16.msra.mxu0 %v4179
    %5650 = vmatpush.bf16.msra.mxu0 %v4178
    %5651 = vmatpush.bf16.msra.mxu0 %v4177
    %5652 = vmatpush.bf16.msra.mxu0 %v4176
    %5653 = vmatpush.bf16.msra.mxu0 %v4175
    %5654 = vmatpush.bf16.msra.mxu0 %v4174
    %5655 = vmatpush.bf16.msra.mxu0 %v4173
    %5656 = vmatpush.bf16.msra.mxu0 %v4172
    %5657 = vmatmul.bf16.gmra.mxu0 %v1269
    %v5658 = vpop.f32.mrf.mxu0
    %v5659 = vadd.f32 %v5646, %v5658
    %v5660 = vpop.f32.mrf.mxu0
    %5661 = vdwg.mxu0
    %5662 = vmatpush.bf16.msra.mxu0 %v4187
    %5663 = vmatpush.bf16.msra.mxu0 %v4186
    %5664 = vmatpush.bf16.msra.mxu0 %v4185
    %5665 = vmatpush.bf16.msra.mxu0 %v4184
    %5666 = vmatpush.bf16.msra.mxu0 %v4183
    %5667 = vmatpush.bf16.msra.mxu0 %v4182
    %5668 = vmatpush.bf16.msra.mxu0 %v4181
    %5669 = vmatpush.bf16.msra.mxu0 %v4180
    %5670 = vmatmul.bf16.gmra.mxu0 %v1270
    %v5671 = vpop.f32.mrf.mxu0
    %v5672 = vadd.f32 %v5659, %v5671
    %v5673 = vpop.f32.mrf.mxu0
    %5674 = vdwg.mxu0
    %5675 = vmatpush.bf16.msra.mxu0 %v4195
    %5676 = vmatpush.bf16.msra.mxu0 %v4194
    %5677 = vmatpush.bf16.msra.mxu0 %v4193
    %5678 = vmatpush.bf16.msra.mxu0 %v4192
    %5679 = vmatpush.bf16.msra.mxu0 %v4191
    %5680 = vmatpush.bf16.msra.mxu0 %v4190
    %5681 = vmatpush.bf16.msra.mxu0 %v4189
    %5682 = vmatpush.bf16.msra.mxu0 %v4188
    %5683 = vmatmul.bf16.gmra.mxu0 %v1271
    %v5684 = vpop.f32.mrf.mxu0
    %v5685 = vadd.f32 %v5672, %v5684
    %v5686 = vpop.f32.mrf.mxu0
    %5687 = vdwg.mxu0
    %5688 = vmatpush.bf16.msra.mxu0 %v4203
    %5689 = vmatpush.bf16.msra.mxu0 %v4202
    %5690 = vmatpush.bf16.msra.mxu0 %v4201
    %5691 = vmatpush.bf16.msra.mxu0 %v4200
    %5692 = vmatpush.bf16.msra.mxu0 %v4199
    %5693 = vmatpush.bf16.msra.mxu0 %v4198
    %5694 = vmatpush.bf16.msra.mxu0 %v4197
    %5695 = vmatpush.bf16.msra.mxu0 %v4196
    %5696 = vmatmul.bf16.gmra.mxu0 %v1272
    %v5697 = vpop.f32.mrf.mxu0
    %v5698 = vadd.f32 %v5685, %v5697
    %v5699 = vpop.f32.mrf.mxu0
    %5700 = vdwg.mxu0
    %5701 = vmatpush.bf16.msra.mxu0 %v4211
    %5702 = vmatpush.bf16.msra.mxu0 %v4210
    %5703 = vmatpush.bf16.msra.mxu0 %v4209
    %5704 = vmatpush.bf16.msra.mxu0 %v4208
    %5705 = vmatpush.bf16.msra.mxu0 %v4207
    %5706 = vmatpush.bf16.msra.mxu0 %v4206
    %5707 = vmatpush.bf16.msra.mxu0 %v4205
    %5708 = vmatpush.bf16.msra.mxu0 %v4204
    %5709 = vmatmul.bf16.gmra.mxu0 %v1273
    %v5710 = vpop.f32.mrf.mxu0
    %v5711 = vadd.f32 %v5698, %v5710
    %v5712 = vpop.f32.mrf.mxu0
    %5713 = vdwg.mxu0
    %5714 = vmatpush.bf16.msra.mxu0 %v4219
    %5715 = vmatpush.bf16.msra.mxu0 %v4218
    %5716 = vmatpush.bf16.msra.mxu0 %v4217
    %5717 = vmatpush.bf16.msra.mxu0 %v4216
    %5718 = vmatpush.bf16.msra.mxu0 %v4215
    %5719 = vmatpush.bf16.msra.mxu0 %v4214
    %5720 = vmatpush.bf16.msra.mxu0 %v4213
    %5721 = vmatpush.bf16.msra.mxu0 %v4212
    %5722 = vmatmul.bf16.gmra.mxu0 %v1274
    %v5723 = vpop.f32.mrf.mxu0
    %v5724 = vadd.f32 %v5711, %v5723
    %v5725 = vpop.f32.mrf.mxu0
    %5726 = vdwg.mxu0
    %5727 = vmatpush.bf16.msra.mxu0 %v4227
    %5728 = vmatpush.bf16.msra.mxu0 %v4226
    %5729 = vmatpush.bf16.msra.mxu0 %v4225
    %5730 = vmatpush.bf16.msra.mxu0 %v4224
    %5731 = vmatpush.bf16.msra.mxu0 %v4223
    %5732 = vmatpush.bf16.msra.mxu0 %v4222
    %5733 = vmatpush.bf16.msra.mxu0 %v4221
    %5734 = vmatpush.bf16.msra.mxu0 %v4220
    %5735 = vmatmul.bf16.gmra.mxu0 %v1275
    %v5736 = vpop.f32.mrf.mxu0
    %v5737 = vadd.f32 %v5724, %v5736
    %v5738 = vpop.f32.mrf.mxu0
    %5739 = vdwg.mxu0
    %v5740 = vmax.f32 %v5737, 0.0
    %v5741 = vpack.c.bf16 %v5740, %v5740
    %v5742 = vld [vmem:[%s3] sm:$0xf]
    %v5743 = vld [vmem:[%s3 + $0x4] sm:$0xf]
    %v5744 = vld [vmem:[%s3 + $0x8] sm:$0xf]
    %v5745 = vld [vmem:[%s3 + $0xc] sm:$0xf]
    %v5746 = vld [vmem:[%s3 + $0x10] sm:$0xf]
    %v5747 = vld [vmem:[%s3 + $0x14] sm:$0xf]
    %v5748 = vld [vmem:[%s3 + $0x18] sm:$0xf]
    %v5749 = vld [vmem:[%s3 + $0x1c] sm:$0xf]
    %v5750 = vld [vmem:[%s3 + $0x20] sm:$0xf]
    %v5751 = vld [vmem:[%s3 + $0x24] sm:$0xf]
    %v5752 = vld [vmem:[%s3 + $0x28] sm:$0xf]
    %v5753 = vld [vmem:[%s3 + $0x2c] sm:$0xf]
    %v5754 = vld [vmem:[%s3 + $0x30] sm:$0xf]
    %v5755 = vld [vmem:[%s3 + $0x34] sm:$0xf]
    %v5756 = vld [vmem:[%s3 + $0x38] sm:$0xf]
    %v5757 = vld [vmem:[%s3 + $0x3c] sm:$0xf]
    %v5758 = vld [vmem:[%s4] sm:$0x1]
    %v5760 = vperm.slane %v5758, 0
    %v5778 = vunpack.c.l.b16 %v5742
    %v5779 = vunpack.c.l.b16 %v5743
    %v5780 = vunpack.c.l.b16 %v5744
    %v5781 = vunpack.c.l.b16 %v5745
    %v5782 = vunpack.c.l.b16 %v5746
    %v5783 = vunpack.c.l.b16 %v5747
    %v5784 = vunpack.c.l.b16 %v5748
    %v5785 = vunpack.c.l.b16 %v5749
    %v5786 = vunpack.c.l.b16 %v5750
    %v5787 = vunpack.c.l.b16 %v5751
    %v5788 = vunpack.c.l.b16 %v5752
    %v5789 = vunpack.c.l.b16 %v5753
    %v5790 = vunpack.c.l.b16 %v5754
    %v5791 = vunpack.c.l.b16 %v5755
    %v5792 = vunpack.c.l.b16 %v5756
    %v5793 = vunpack.c.l.b16 %v5757
    %v5794 = vpack.c.b16 %v5779, %v5778
    %v5795 = vpack.c.b16 %v5781, %v5780
    %v5796 = vpack.c.b16 %v5783, %v5782
    %v5797 = vpack.c.b16 %v5785, %v5784
    %v5798 = vpack.c.b16 %v5787, %v5786
    %v5799 = vpack.c.b16 %v5789, %v5788
    %v5800 = vpack.c.b16 %v5791, %v5790
    %v5801 = vpack.c.b16 %v5793, %v5792
    %5810 = vmatpush.bf16.msra.mxu0 %v5801
    %5811 = vmatpush.bf16.msra.mxu0 %v5800
    %5812 = vmatpush.bf16.msra.mxu0 %v5799
    %5813 = vmatpush.bf16.msra.mxu0 %v5798
    %5814 = vmatpush.bf16.msra.mxu0 %v5797
    %5815 = vmatpush.bf16.msra.mxu0 %v5796
    %5816 = vmatpush.bf16.msra.mxu0 %v5795
    %5817 = vmatpush.bf16.msra.mxu0 %v5794
    %5818 = vmatmul.bf16.gmra.mxu0 %v5741
    %v5819 = vpop.f32.mrf.mxu0
    %v5820 = vadd.f32 %v5760, %v5819
    %v5821 = vpop.f32.mrf.mxu0
    %5822 = vdwg.mxu0
    %vm5823 = vcmask 74752
    %v5824 = vsel %vm5823, %v5820, -inf
    %5825 = vmax.xlane.f32.xlu0 %v5824
    %v5826 = vpop.xlane.xlu0 %5825
    %v5827 = vsub.f32 %v5820, %v5826
    %v5828 = vmul.f32 %v5827, 1.442695
    %v5829 = vpow.pop %v5828
    %v5830 = vsel %vm5823, %v5829, 0.0
    %5831 = vadd.xlane.f32.xlu0 %v5830
    %v5832 = vpop.xlane.xlu0 %5831
    %v5833 = vlog2.pop %v5832
    %v5834 = vmul.f32 %v5833, 0.6931472
    %v5835 = vadd.f32 %v5834, %v5826
    %v5836 = vsub.f32 %v5820, %v5835
    %5837 = vst.msk [vmem:[#allocation2] sm:$0x3] %vm5823, %v5836
    // Predicated region
    $region22: #{net_forward.5} parent=1 // pred_check
      _
    $region23: #{net_forward.5} parent=1 // pred_check_branch
      %5839 = sbr.rel (0) target = $region25
    $region24: #{net_forward.5} parent=1 // pred_region
      %5841 = vsyncadd [#allocation3], 0
      %s5843 = sshll.u32 [#allocation2], 4
      %s5844 = int_to_ptr.vmem [resolvable:$true] %s5843
      %s5845 = sshll.u32 %s5, 4
      %s5846 = int_to_ptr.hbm [resolvable:$true] %s5845
      %5848 = dma.vmem_to_hbm [thread:$0]  %s5844, 32, %s5846, [#allocation3]
    $region25: #{net_forward.5} parent=1 // pred_fallthru
      _
    // Predicated region
    $region26: #{net_forward.5} parent=1 // pred_check
      _
    $region27: #{net_forward.5} parent=1 // pred_check_branch
      %5850 = sbr.rel (0) target = $region29
    $region28: #{net_forward.5} parent=1 // pred_region
      %5852 = dma.done [#allocation3], 32
    $region29: #{net_forward.5} parent=1 // pred_fallthru
      _
    %5853 = vsyncpa [#allocation3], 1

</llo_original>
